<compile_context>
chip_gen: v5e
topology: v5e:2x2
jax: 0.10.0
libtpu: 0.0.40
codegen_flags: <defaults>
</compile_context>

<pallas_src>
import functools

import jax
import jax.numpy as jnp
from jax.experimental import pallas as pl
from jax.experimental.pallas import tpu as pltpu


# ----------------------------- Pallas kernels ------------------------------


def _matmul_bn_relu_kernel(p_ref, w_ref, s_ref, b_ref, o_ref):
    """Conv-as-GEMM: p (M, K) bf16, w (K, Cout) bf16, s/b (1, Cout) f32,
    o (M, Cout) f32.  BatchNorm folded into scale/bias (eval mode)."""
    acc = jnp.dot(p_ref[...], w_ref[...], preferred_element_type=jnp.float32)
    o_ref[...] = jnp.maximum(acc * s_ref[...] + b_ref[...], 0.0)


def _fused_heads_kernel(p0_ref, p1_ref, w0_ref, w1_ref, s0_ref, b0_ref,
                        s1_ref, b1_ref, o_ref, *, c0, c1, pool_cin,
                        pool_taps):
    """Fused stride-2 heads, writing the channel-concatenated output.

    p0: branch0 patches (M, pool_taps*pool_cin) bf16 (reused for avg-pool)
    p1: branch1 final-conv patches (M, K1) bf16
    o : (M, c0 + c1 + pool_cin) f32  ==  [branch0 | branch1 | avgpool]
    """
    p0 = p0_ref[...]

    # branch0: 3x3 stride-2 conv + BN + ReLU -> channels [0, c0)
    y0 = jnp.dot(p0, w0_ref[...], preferred_element_type=jnp.float32)
    o_ref[:, 0:c0] = jnp.maximum(y0 * s0_ref[...] + b0_ref[...], 0.0)

    # branch1 (last stage): 3x3 stride-2 conv + BN + ReLU -> [c0, c0+c1)
    y1 = jnp.dot(p1_ref[...], w1_ref[...], preferred_element_type=jnp.float32)
    o_ref[:, c0:c0 + c1] = jnp.maximum(y1 * s1_ref[...] + b1_ref[...], 0.0)

    # branch2: 3x3 stride-2 avg-pool.  Its windows are exactly branch0's
    # patch taps, so sum lane-slices of p0 (VPU adds, no extra HBM traffic).
    pool = p0[:, 0:pool_cin].astype(jnp.float32)
    for t in range(1, pool_taps):
        pool = pool + p0[:, t * pool_cin:(t + 1) * pool_cin].astype(
            jnp.float32)
    o_ref[:, c0 + c1:c0 + c1 + pool_cin] = pool * (1.0 / pool_taps)


# ------------------------------ JAX wrappers --------------------------------


def _round_up(x, m):
    return (x + m - 1) // m * m


def _vmem_specs(n):
    return [pl.BlockSpec(memory_space=pltpu.MemorySpace.VMEM)
            for _ in range(n)]


def _im2col(x_nhwc, ksize, stride, padding):
    """(N,H,W,C) -> (N*Ho*Wo, ksize*ksize*C): taps folded into the K dim."""
    if padding:
        x_nhwc = jnp.pad(
            x_nhwc, ((0, 0), (padding, padding), (padding, padding), (0, 0)))
    n, hp, wp, c = x_nhwc.shape
    ho = (hp - ksize) // stride + 1
    wo = (wp - ksize) // stride + 1
    cols = []
    for kh in range(ksize):
        for kw in range(ksize):
            t = x_nhwc[:, kh:kh + (ho - 1) * stride + 1:stride,
                       kw:kw + (wo - 1) * stride + 1:stride, :]
            cols.append(t.reshape(n * ho * wo, c))
    return jnp.concatenate(cols, axis=-1), ho, wo


def _fold_bn(w_oihw, gamma, beta, mean, var, eps=1e-3):
    """(Cout,Cin,KH,KW) -> (KH*KW*Cin, Cout) bf16 weights + f32 scale/bias.

    K index ordering (tap-major, channel-minor) matches _im2col."""
    cout, cin, kh, kw = w_oihw.shape
    w = jnp.transpose(w_oihw, (2, 3, 1, 0)).reshape(kh * kw * cin, cout)
    scale = gamma / jnp.sqrt(var + eps)
    bias = beta - mean * scale
    return (w.astype(jnp.bfloat16),
            scale.reshape(1, cout).astype(jnp.float32),
            bias.reshape(1, cout).astype(jnp.float32))


def _pad_rows(p, mult=8):
    m = p.shape[0]
    m_pad = _round_up(m, mult)
    if m_pad != m:
        p = jnp.pad(p, ((0, m_pad - m), (0, 0)))
    return p, m


def conv_bn_relu_gemm(patches, prm, n, ho, wo):
    """patches: (N*Ho*Wo, K) f32.  Returns (N, Ho, Wo, Cout) f32."""
    patches, m = _pad_rows(patches)
    w, scale, bias = _fold_bn(**prm)
    cout = w.shape[1]
    out = pl.pallas_call(
        _matmul_bn_relu_kernel,
        out_shape=jax.ShapeDtypeStruct((patches.shape[0], cout), jnp.float32),
        in_specs=_vmem_specs(4),
        out_specs=pl.BlockSpec(memory_space=pltpu.MemorySpace.VMEM),
    )(patches.astype(jnp.bfloat16), w, scale, bias)
    return out[:m].reshape(n, ho, wo, cout)


def fused_stride2_heads(p0, p1, prm0, prm1, pool_cin):
    """p0/p1: patch matrices (M, K) f32 for branch0 / branch1-final conv.
    Returns (M, c0 + c1 + pool_cin) f32: [branch0 | branch1 | avgpool]."""
    assert p0.shape[0] == p1.shape[0]
    p0, m = _pad_rows(p0)
    p1, _ = _pad_rows(p1)
    w0, s0, b0 = _fold_bn(**prm0)
    w1, s1, b1 = _fold_bn(**prm1)
    c0, c1 = w0.shape[1], w1.shape[1]
    pool_taps = p0.shape[1] // pool_cin
    kernel = functools.partial(_fused_heads_kernel, c0=c0, c1=c1,
                               pool_cin=pool_cin, pool_taps=pool_taps)
    out = pl.pallas_call(
        kernel,
        out_shape=jax.ShapeDtypeStruct((p0.shape[0], c0 + c1 + pool_cin),
                                       jnp.float32),
        in_specs=_vmem_specs(8),
        out_specs=pl.BlockSpec(memory_space=pltpu.MemorySpace.VMEM),
    )(p0.astype(jnp.bfloat16), p1.astype(jnp.bfloat16),
      w0, w1, s0, b0, s1, b1)
    return out[:m]


# ------------------------------ Mixed_B module ------------------------------


def init_basic_conv(key, cin, cout, k):
    kw_, kg, kb, km, kv = jax.random.split(key, 5)
    return dict(
        w_oihw=jax.random.normal(kw_, (cout, cin, k, k), jnp.float32) * 0.05,
        gamma=jax.random.uniform(kg, (cout,), jnp.float32, 0.5, 1.5),
        beta=jax.random.normal(kb, (cout,), jnp.float32) * 0.1,
        mean=jax.random.normal(km, (cout,), jnp.float32) * 0.1,
        var=jax.random.uniform(kv, (cout,), jnp.float32, 0.5, 1.5),
    )


def init_mixed_b(key):
    k0, k1, k2, k3 = jax.random.split(key, 4)
    return dict(
        b0=init_basic_conv(k0, 320, 384, 3),     # BasicConv2d(320, 384, 3, 2)
        b1_0=init_basic_conv(k1, 320, 256, 1),   # BasicConv2d(320, 256, 1, 1)
        b1_1=init_basic_conv(k2, 256, 256, 3),   # BasicConv2d(256, 256, 3, 1, 1)
        b1_2=init_basic_conv(k3, 256, 384, 3),   # BasicConv2d(256, 384, 3, 2)
    )


def mixed_b_forward(x_nchw, params):
    x = jnp.transpose(x_nchw, (0, 2, 3, 1))                 # NCHW -> NHWC
    n, h, w, cin = x.shape

    # branch1 stage 0: 1x1 conv == plain GEMM (no im2col needed)
    x1 = conv_bn_relu_gemm(x.reshape(n * h * w, cin), params["b1_0"], n, h, w)

    # branch1 stage 1: 3x3, stride 1, pad 1
    p11, ho1, wo1 = _im2col(x1, 3, 1, 1)
    x11 = conv_bn_relu_gemm(p11, params["b1_1"], n, ho1, wo1)

    # fused stride-2 heads: branch0 conv + branch1 final conv + avg-pool,
    # written directly as the channel-concatenated block output.
    p0, ho2, wo2 = _im2col(x, 3, 2, 0)
    p12, _, _ = _im2col(x11, 3, 2, 0)
    out = fused_stride2_heads(p0, p12, params["b0"], params["b1_2"], cin)
    out = out.reshape(n, ho2, wo2, -1)
    return jnp.transpose(out, (0, 3, 1, 2))                 # NHWC -> NCHW


# ------------------------- pure-JAX references (check) -----------------------


def _ref_conv_bn_relu(x, w_oihw, gamma, beta, mean, var, *, stride, padding,
                      eps=1e-3, operand_dtype=jnp.float32):
    out = jax.lax.conv_general_dilated(
        x.astype(operand_dtype),
        jnp.transpose(w_oihw, (2, 3, 1, 0)).astype(operand_dtype),
        window_strides=(stride, stride),
        padding=[(padding, padding), (padding, padding)],
        dimension_numbers=("NHWC", "HWIO", "NHWC"),
        preferred_element_type=jnp.float32,
        precision=jax.lax.Precision.HIGHEST,
    )
    scale = gamma / jnp.sqrt(var + eps)
    return jnp.maximum(out * scale + (beta - mean * scale), 0.0)


def _ref_mixed_b(x_nchw, params, operand_dtype=jnp.float32):
    x = jnp.transpose(x_nchw, (0, 2, 3, 1))
    conv = functools.partial(_ref_conv_bn_relu, operand_dtype=operand_dtype)
    x0 = conv(x, **params["b0"], stride=2, padding=0)
    x1 = conv(x, **params["b1_0"], stride=1, padding=0)
    x1 = conv(x1, **params["b1_1"], stride=1, padding=1)
    x1 = conv(x1, **params["b1_2"], stride=2, padding=0)
    xp = x.astype(operand_dtype).astype(jnp.float32)
    x2 = jax.lax.reduce_window(
        xp, 0.0, jax.lax.add, (1, 3, 3, 1), (1, 2, 2, 1), "VALID") / 9.0
    out = jnp.concatenate([x0, x1, x2], axis=-1)
    return jnp.transpose(out, (0, 3, 1, 2))


# ----------------------------------- main ------------------------------------


if __name__ == "__main__":
    key = jax.random.PRNGKey(0)
    kx, kp = jax.random.split(key)

    # Small spatial size; channel counts are fixed by the module (320 in).
    N, C, H, W = 2, 320, 9, 9
    x = jax.random.normal(kx, (N, C, H, W), jnp.float32)
    params = init_mixed_b(kp)

    fwd = jax.jit(mixed_b_forward)
    out = jax.block_until_ready(fwd(x, params))
    assert out.shape == (N, 384 + 384 + 320, 4, 4), out.shape

    # Exact-logic check against a reference that uses the same bf16 operand
    # rounding (both accumulate in f32): should agree to ~1e-4.
    ref_bf16 = jax.block_until_ready(
        jax.jit(functools.partial(_ref_mixed_b, operand_dtype=jnp.bfloat16))(
            x, params))
    err_matched = float(jnp.max(jnp.abs(out - ref_bf16)))
    assert err_matched < 2e-2, f"matched-precision max_err={err_matched}"

    # Sanity check against the full-f32 reference (bounds bf16 quantization
    # error accumulated over the 3-conv branch).
    ref_f32 = jax.block_until_ready(jax.jit(_ref_mixed_b)(x, params))
    err_f32 = float(jnp.max(jnp.abs(out - ref_f32)))
    assert err_f32 < 3e-1, f"f32-reference max_err={err_f32}"

    print("KERNEL_OK")
</pallas_src>

<mosaic_0001>
module attributes {stable_mosaic.version = 11 : i64} {
  func.func @_matmul_bn_relu_kernel(%arg0: memref<168x320xbf16, #tpu.memory_space<vmem>>, %arg1: memref<320x256xbf16, #tpu.memory_space<vmem>>, %arg2: memref<1x256xf32, #tpu.memory_space<vmem>>, %arg3: memref<1x256xf32, #tpu.memory_space<vmem>>, %arg4: memref<168x256xf32, #tpu.memory_space<vmem>>) attributes {dimension_semantics = [], scalar_prefetch = 0 : i64, scratch_operands = 0 : i64, tpu.core_type = #tpu.core_type<tc>} {
    %c0 = arith.constant 0 : index
    %c0_0 = arith.constant 0 : index
    %0 = vector.load %arg0[%c0, %c0_0] : memref<168x320xbf16, #tpu.memory_space<vmem>>, vector<168x320xbf16>
    %c0_1 = arith.constant 0 : index
    %c0_2 = arith.constant 0 : index
    %1 = vector.load %arg1[%c0_1, %c0_2] : memref<320x256xbf16, #tpu.memory_space<vmem>>, vector<320x256xbf16>
    %cst = arith.constant dense<0.000000e+00> : vector<168x256xf32>
    %2 = tpu.matmul %0, %1, %cst {dimension_numbers = #tpu.dot_dimension_numbers<[1], [0], [0], [1], [0, 0, 1, 1], [], []>} : vector<168x320xbf16>, vector<320x256xbf16>, vector<168x256xf32> -> vector<168x256xf32>
    %c0_3 = arith.constant 0 : index
    %c0_4 = arith.constant 0 : index
    %3 = vector.load %arg2[%c0_3, %c0_4] : memref<1x256xf32, #tpu.memory_space<vmem>>, vector<1x256xf32>
    %4 = vector.broadcast %3 : vector<1x256xf32> to vector<168x256xf32>
    %5 = arith.mulf %2, %4 : vector<168x256xf32>
    %c0_5 = arith.constant 0 : index
    %c0_6 = arith.constant 0 : index
    %6 = vector.load %arg3[%c0_5, %c0_6] : memref<1x256xf32, #tpu.memory_space<vmem>>, vector<1x256xf32>
    %7 = vector.broadcast %6 : vector<1x256xf32> to vector<168x256xf32>
    %8 = arith.addf %5, %7 : vector<168x256xf32>
    %cst_7 = arith.constant 0.000000e+00 : f32
    %9 = vector.broadcast %cst_7 : f32 to vector<168x256xf32>
    %10 = arith.maximumf %8, %9 : vector<168x256xf32>
    %c0_8 = arith.constant 0 : index
    %c0_9 = arith.constant 0 : index
    %11 = vector.load %arg4[%c0_8, %c0_9] : memref<168x256xf32, #tpu.memory_space<vmem>>, vector<168x256xf32>
    tpu.vector_store %arg4[%c0_8, %c0_9], %10 {strides = array<i32>} : memref<168x256xf32, #tpu.memory_space<vmem>>, vector<168x256xf32>,
    return
  }
}

module attributes {stable_mosaic.version = 11 : i64} {
  func.func @_matmul_bn_relu_kernel(%arg0: memref<168x2304xbf16, #tpu.memory_space<vmem>>, %arg1: memref<2304x256xbf16, #tpu.memory_space<vmem>>, %arg2: memref<1x256xf32, #tpu.memory_space<vmem>>, %arg3: memref<1x256xf32, #tpu.memory_space<vmem>>, %arg4: memref<168x256xf32, #tpu.memory_space<vmem>>) attributes {dimension_semantics = [], scalar_prefetch = 0 : i64, scratch_operands = 0 : i64, tpu.core_type = #tpu.core_type<tc>} {
    %c0 = arith.constant 0 : index
    %c0_0 = arith.constant 0 : index
    %0 = vector.load %arg0[%c0, %c0_0] : memref<168x2304xbf16, #tpu.memory_space<vmem>>, vector<168x2304xbf16>
    %c0_1 = arith.constant 0 : index
    %c0_2 = arith.constant 0 : index
    %1 = vector.load %arg1[%c0_1, %c0_2] : memref<2304x256xbf16, #tpu.memory_space<vmem>>, vector<2304x256xbf16>
    %cst = arith.constant dense<0.000000e+00> : vector<168x256xf32>
    %2 = tpu.matmul %0, %1, %cst {dimension_numbers = #tpu.dot_dimension_numbers<[1], [0], [0], [1], [0, 0, 1, 1], [], []>} : vector<168x2304xbf16>, vector<2304x256xbf16>, vector<168x256xf32> -> vector<168x256xf32>
    %c0_3 = arith.constant 0 : index
    %c0_4 = arith.constant 0 : index
    %3 = vector.load %arg2[%c0_3, %c0_4] : memref<1x256xf32, #tpu.memory_space<vmem>>, vector<1x256xf32>
    %4 = vector.broadcast %3 : vector<1x256xf32> to vector<168x256xf32>
    %5 = arith.mulf %2, %4 : vector<168x256xf32>
    %c0_5 = arith.constant 0 : index
    %c0_6 = arith.constant 0 : index
    %6 = vector.load %arg3[%c0_5, %c0_6] : memref<1x256xf32, #tpu.memory_space<vmem>>, vector<1x256xf32>
    %7 = vector.broadcast %6 : vector<1x256xf32> to vector<168x256xf32>
    %8 = arith.addf %5, %7 : vector<168x256xf32>
    %cst_7 = arith.constant 0.000000e+00 : f32
    %9 = vector.broadcast %cst_7 : f32 to vector<168x256xf32>
    %10 = arith.maximumf %8, %9 : vector<168x256xf32>
    %c0_8 = arith.constant 0 : index
    %c0_9 = arith.constant 0 : index
    %11 = vector.load %arg4[%c0_8, %c0_9] : memref<168x256xf32, #tpu.memory_space<vmem>>, vector<168x256xf32>
    tpu.vector_store %arg4[%c0_8, %c0_9], %10 {strides = array<i32>} : memref<168x256xf32, #tpu.memory_space<vmem>>, vector<168x256xf32>,
    return
  }
}

module attributes {stable_mosaic.version = 11 : i64} {
  func.func @_fused_heads_kernel(%arg0: memref<32x2880xbf16, #tpu.memory_space<vmem>>, %arg1: memref<32x2304xbf16, #tpu.memory_space<vmem>>, %arg2: memref<2880x384xbf16, #tpu.memory_space<vmem>>, %arg3: memref<2304x384xbf16, #tpu.memory_space<vmem>>, %arg4: memref<1x384xf32, #tpu.memory_space<vmem>>, %arg5: memref<1x384xf32, #tpu.memory_space<vmem>>, %arg6: memref<1x384xf32, #tpu.memory_space<vmem>>, %arg7: memref<1x384xf32, #tpu.memory_space<vmem>>, %arg8: memref<32x1088xf32, #tpu.memory_space<vmem>>) attributes {dimension_semantics = [], scalar_prefetch = 0 : i64, scratch_operands = 0 : i64, tpu.core_type = #tpu.core_type<tc>} {
    %c0 = arith.constant 0 : index
    %c0_0 = arith.constant 0 : index
    %0 = vector.load %arg0[%c0, %c0_0] : memref<32x2880xbf16, #tpu.memory_space<vmem>>, vector<32x2880xbf16>
    %c0_1 = arith.constant 0 : index
    %c0_2 = arith.constant 0 : index
    %1 = vector.load %arg2[%c0_1, %c0_2] : memref<2880x384xbf16, #tpu.memory_space<vmem>>, vector<2880x384xbf16>
    %cst = arith.constant dense<0.000000e+00> : vector<32x384xf32>
    %2 = tpu.matmul %0, %1, %cst {dimension_numbers = #tpu.dot_dimension_numbers<[1], [0], [0], [1], [0, 0, 1, 1], [], []>} : vector<32x2880xbf16>, vector<2880x384xbf16>, vector<32x384xf32> -> vector<32x384xf32>
    %c0_3 = arith.constant 0 : index
    %c0_4 = arith.constant 0 : index
    %3 = vector.load %arg4[%c0_3, %c0_4] : memref<1x384xf32, #tpu.memory_space<vmem>>, vector<1x384xf32>
    %4 = vector.broadcast %3 : vector<1x384xf32> to vector<32x384xf32>
    %5 = arith.mulf %2, %4 : vector<32x384xf32>
    %c0_5 = arith.constant 0 : index
    %c0_6 = arith.constant 0 : index
    %6 = vector.load %arg5[%c0_5, %c0_6] : memref<1x384xf32, #tpu.memory_space<vmem>>, vector<1x384xf32>
    %7 = vector.broadcast %6 : vector<1x384xf32> to vector<32x384xf32>
    %8 = arith.addf %5, %7 : vector<32x384xf32>
    %cst_7 = arith.constant 0.000000e+00 : f32
    %9 = vector.broadcast %cst_7 : f32 to vector<32x384xf32>
    %10 = arith.maximumf %8, %9 : vector<32x384xf32>
    %c0_8 = arith.constant 0 : index
    %c0_9 = arith.constant 0 : index
    %11 = vector.load %arg8[%c0_8, %c0_9] : memref<32x1088xf32, #tpu.memory_space<vmem>>, vector<32x384xf32>
    tpu.vector_store %arg8[%c0_8, %c0_9], %10 {strides = array<i32>} : memref<32x1088xf32, #tpu.memory_space<vmem>>, vector<32x384xf32>,
    %c0_10 = arith.constant 0 : index
    %c0_11 = arith.constant 0 : index
    %12 = vector.load %arg1[%c0_10, %c0_11] : memref<32x2304xbf16, #tpu.memory_space<vmem>>, vector<32x2304xbf16>
    %c0_12 = arith.constant 0 : index
    %c0_13 = arith.constant 0 : index
    %13 = vector.load %arg3[%c0_12, %c0_13] : memref<2304x384xbf16, #tpu.memory_space<vmem>>, vector<2304x384xbf16>
    %cst_14 = arith.constant dense<0.000000e+00> : vector<32x384xf32>
    %14 = tpu.matmul %12, %13, %cst_14 {dimension_numbers = #tpu.dot_dimension_numbers<[1], [0], [0], [1], [0, 0, 1, 1], [], []>} : vector<32x2304xbf16>, vector<2304x384xbf16>, vector<32x384xf32> -> vector<32x384xf32>
    %c0_15 = arith.constant 0 : index
    %c0_16 = arith.constant 0 : index
    %15 = vector.load %arg6[%c0_15, %c0_16] : memref<1x384xf32, #tpu.memory_space<vmem>>, vector<1x384xf32>
    %16 = vector.broadcast %15 : vector<1x384xf32> to vector<32x384xf32>
    %17 = arith.mulf %14, %16 : vector<32x384xf32>
    %c0_17 = arith.constant 0 : index
    %c0_18 = arith.constant 0 : index
    %18 = vector.load %arg7[%c0_17, %c0_18] : memref<1x384xf32, #tpu.memory_space<vmem>>, vector<1x384xf32>
    %19 = vector.broadcast %18 : vector<1x384xf32> to vector<32x384xf32>
    %20 = arith.addf %17, %19 : vector<32x384xf32>
    %cst_19 = arith.constant 0.000000e+00 : f32
    %21 = vector.broadcast %cst_19 : f32 to vector<32x384xf32>
    %22 = arith.maximumf %20, %21 : vector<32x384xf32>
    %c0_20 = arith.constant 0 : index
    %c384 = arith.constant 384 : index
    %23 = vector.load %arg8[%c0_20, %c384] : memref<32x1088xf32, #tpu.memory_space<vmem>>, vector<32x384xf32>
    tpu.vector_store %arg8[%c0_20, %c384], %22 {strides = array<i32>} : memref<32x1088xf32, #tpu.memory_space<vmem>>, vector<32x384xf32>,
    %24 = vector.extract_strided_slice %0 {offsets = [0, 0], sizes = [32, 320], strides = [1, 1]} : vector<32x2880xbf16> to vector<32x320xbf16>
    %25 = arith.extf %24 : vector<32x320xbf16> to vector<32x320xf32>
    %26 = vector.extract_strided_slice %0 {offsets = [0, 320], sizes = [32, 320], strides = [1, 1]} : vector<32x2880xbf16> to vector<32x320xbf16>
    %27 = arith.extf %26 : vector<32x320xbf16> to vector<32x320xf32>
    %28 = arith.addf %25, %27 : vector<32x320xf32>
    %29 = vector.extract_strided_slice %0 {offsets = [0, 640], sizes = [32, 320], strides = [1, 1]} : vector<32x2880xbf16> to vector<32x320xbf16>
    %30 = arith.extf %29 : vector<32x320xbf16> to vector<32x320xf32>
    %31 = arith.addf %28, %30 : vector<32x320xf32>
    %32 = vector.extract_strided_slice %0 {offsets = [0, 960], sizes = [32, 320], strides = [1, 1]} : vector<32x2880xbf16> to vector<32x320xbf16>
    %33 = arith.extf %32 : vector<32x320xbf16> to vector<32x320xf32>
    %34 = arith.addf %31, %33 : vector<32x320xf32>
    %35 = vector.extract_strided_slice %0 {offsets = [0, 1280], sizes = [32, 320], strides = [1, 1]} : vector<32x2880xbf16> to vector<32x320xbf16>
    %36 = arith.extf %35 : vector<32x320xbf16> to vector<32x320xf32>
    %37 = arith.addf %34, %36 : vector<32x320xf32>
    %38 = vector.extract_strided_slice %0 {offsets = [0, 1600], sizes = [32, 320], strides = [1, 1]} : vector<32x2880xbf16> to vector<32x320xbf16>
    %39 = arith.extf %38 : vector<32x320xbf16> to vector<32x320xf32>
    %40 = arith.addf %37, %39 : vector<32x320xf32>
    %41 = vector.extract_strided_slice %0 {offsets = [0, 1920], sizes = [32, 320], strides = [1, 1]} : vector<32x2880xbf16> to vector<32x320xbf16>
    %42 = arith.extf %41 : vector<32x320xbf16> to vector<32x320xf32>
    %43 = arith.addf %40, %42 : vector<32x320xf32>
    %44 = vector.extract_strided_slice %0 {offsets = [0, 2240], sizes = [32, 320], strides = [1, 1]} : vector<32x2880xbf16> to vector<32x320xbf16>
    %45 = arith.extf %44 : vector<32x320xbf16> to vector<32x320xf32>
    %46 = arith.addf %43, %45 : vector<32x320xf32>
    %47 = vector.extract_strided_slice %0 {offsets = [0, 2560], sizes = [32, 320], strides = [1, 1]} : vector<32x2880xbf16> to vector<32x320xbf16>
    %48 = arith.extf %47 : vector<32x320xbf16> to vector<32x320xf32>
    %49 = arith.addf %46, %48 : vector<32x320xf32>
    %cst_21 = arith.constant 0.111111112 : f32
    %50 = vector.broadcast %cst_21 : f32 to vector<32x320xf32>
    %51 = arith.mulf %49, %50 : vector<32x320xf32>
    %c0_22 = arith.constant 0 : index
    %c768 = arith.constant 768 : index
    %52 = vector.load %arg8[%c0_22, %c768] : memref<32x1088xf32, #tpu.memory_space<vmem>>, vector<32x320xf32>
    tpu.vector_store %arg8[%c0_22, %c768], %51 {strides = array<i32>} : memref<32x1088xf32, #tpu.memory_space<vmem>>, vector<32x320xf32>,
    return
  }
}

</mosaic_0001>

<llo_original>
// kernel: mixed_b_forward.3
$region0: #{mixed_b_forward.3}
  #allocation0 [shape = 'u32[]', space=smem, size = 0x4, offset = 0x4, fixed_abs, tag = 'smem constant byte address 0x4 - core index']
  #allocation1 [shape = 'u32[72,128]{1,0:T(1,128)}', space=vmem, size = 0x9000, scoped, tag = 'internal scratch']
  %s0 = inlined_call_operand.vmem [shape: bf16[168,320], index: 0, kind: input, shape index: {}]
  %s1 = inlined_call_operand.vmem [shape: bf16[320,256], index: 1, kind: input, shape index: {}]
  %s2 = inlined_call_operand.vmem [shape: f32[1,256], index: 2, kind: input, shape index: {}]
  %s3 = inlined_call_operand.vmem [shape: f32[1,256], index: 3, kind: input, shape index: {}]
  %s4 = inlined_call_operand.vmem [shape: f32[168,256], index: 4, kind: output, shape index: {}]
  %s5 = sld [smem:[#allocation0]]
  $region26: #{mixed_b_forward.3} parent=0
    _
  %s7 = ssub.s32 1, %s5
  %s8 = scalar_select 0, %s7, %s5
  // Predicated region
  $region2: #{mixed_b_forward.3} parent=0 // pred_check
    _
  $region3: #{mixed_b_forward.3} parent=0 // pred_check_branch
    %10 = sbr.rel (0) target = $region5
  $region4: #{mixed_b_forward.3} parent=0 // pred_region
    _
  $region5: #{mixed_b_forward.3} parent=0 // pred_fallthru
    _
  // Predicated region
  $region6: #{mixed_b_forward.3} parent=0 // pred_check
    _
  $region7: #{mixed_b_forward.3} parent=0 // pred_check_branch
    %12 = sbr.rel (0) target = $region9
  $region8: #{mixed_b_forward.3} parent=0 // pred_region
    _
  $region9: #{mixed_b_forward.3} parent=0 // pred_fallthru
    _
  // Predicated region
  $region10: #{mixed_b_forward.3} parent=0 // pred_check
    _
  $region11: #{mixed_b_forward.3} parent=0 // pred_check_branch
    %14 = sbr.rel (0) target = $region13
  $region12: #{mixed_b_forward.3} parent=0 // pred_region
    _
  $region13: #{mixed_b_forward.3} parent=0 // pred_fallthru
    _
  // Predicated region
  $region14: #{mixed_b_forward.3} parent=0 // pred_check
    _
  $region15: #{mixed_b_forward.3} parent=0 // pred_check_branch
    %16 = sbr.rel (0) target = $region17
  $region16: #{mixed_b_forward.3} parent=0 // pred_region
    _
  $region17: #{mixed_b_forward.3} parent=0 // pred_fallthru
    _
  %v18 = vld [vmem:[%s0] sm:$0xff]
  %v19 = vld [vmem:[%s0 + $0x8] sm:$0xf]
  %v20 = vld [vmem:[%s0 + $0xc] sm:$0xff]
  %v21 = vld [vmem:[%s0 + $0x14] sm:$0xf]
  %v22 = vld [vmem:[%s0 + $0x18] sm:$0xff]
  %v23 = vld [vmem:[%s0 + $0x20] sm:$0xf]
  %v24 = vld [vmem:[%s0 + $0x24] sm:$0xff]
  %v25 = vld [vmem:[%s0 + $0x2c] sm:$0xf]
  %v26 = vld [vmem:[%s0 + $0x30] sm:$0xff]
  %v27 = vld [vmem:[%s0 + $0x38] sm:$0xf]
  %v28 = vld [vmem:[%s0 + $0x3c] sm:$0xff]
  %v29 = vld [vmem:[%s0 + $0x44] sm:$0xf]
  %v30 = vld [vmem:[%s0 + $0x48] sm:$0xff]
  %v31 = vld [vmem:[%s0 + $0x50] sm:$0xf]
  %v32 = vld [vmem:[%s0 + $0x54] sm:$0xff]
  %v33 = vld [vmem:[%s0 + $0x5c] sm:$0xf]
  %v34 = vld [vmem:[%s0 + $0x60] sm:$0xff]
  %v35 = vld [vmem:[%s0 + $0x68] sm:$0xf]
  %v36 = vld [vmem:[%s0 + $0x6c] sm:$0xff]
  %v37 = vld [vmem:[%s0 + $0x74] sm:$0xf]
  %v38 = vld [vmem:[%s0 + $0x78] sm:$0xff]
  %v39 = vld [vmem:[%s0 + $0x80] sm:$0xf]
  %v40 = vld [vmem:[%s0 + $0x84] sm:$0xff]
  %v41 = vld [vmem:[%s0 + $0x8c] sm:$0xf]
  %v42 = vld [vmem:[%s0 + $0x90] sm:$0xff]
  %v43 = vld [vmem:[%s0 + $0x98] sm:$0xf]
  %v44 = vld [vmem:[%s0 + $0x9c] sm:$0xff]
  %v45 = vld [vmem:[%s0 + $0xa4] sm:$0xf]
  %v46 = vld [vmem:[%s0 + $0xa8] sm:$0xff]
  %v47 = vld [vmem:[%s0 + $0xb0] sm:$0xf]
  %v48 = vld [vmem:[%s0 + $0xb4] sm:$0xff]
  %v49 = vld [vmem:[%s0 + $0xbc] sm:$0xf]
  %v50 = vld [vmem:[%s0 + $0xc0] sm:$0xff]
  %v51 = vld [vmem:[%s0 + $0xc8] sm:$0xf]
  %v52 = vld [vmem:[%s0 + $0xcc] sm:$0xff]
  %v53 = vld [vmem:[%s0 + $0xd4] sm:$0xf]
  %v54 = vld [vmem:[%s0 + $0xd8] sm:$0xff]
  %v55 = vld [vmem:[%s0 + $0xe0] sm:$0xf]
  %v56 = vld [vmem:[%s0 + $0xe4] sm:$0xff]
  %v57 = vld [vmem:[%s0 + $0xec] sm:$0xf]
  %v58 = vld [vmem:[%s0 + $0xf0] sm:$0xff]
  %v59 = vld [vmem:[%s0 + $0xf8] sm:$0xf]
  %v60 = vld [vmem:[%s1] sm:$0xff]
  %v61 = vld [vmem:[%s1 + $0x8] sm:$0xff]
  %v62 = vld [vmem:[%s1 + $0x10] sm:$0xff]
  %v63 = vld [vmem:[%s1 + $0x18] sm:$0xff]
  %v64 = vld [vmem:[%s1 + $0x20] sm:$0xff]
  %v65 = vld [vmem:[%s1 + $0x28] sm:$0xff]
  %v66 = vld [vmem:[%s1 + $0x30] sm:$0xff]
  %v67 = vld [vmem:[%s1 + $0x38] sm:$0xff]
  %v68 = vld [vmem:[%s1 + $0x40] sm:$0xff]
  %v69 = vld [vmem:[%s1 + $0x48] sm:$0xff]
  %v70 = vld [vmem:[%s1 + $0x50] sm:$0xff]
  %v71 = vld [vmem:[%s1 + $0x58] sm:$0xff]
  %v72 = vld [vmem:[%s1 + $0x60] sm:$0xff]
  %v73 = vld [vmem:[%s1 + $0x68] sm:$0xff]
  %v74 = vld [vmem:[%s1 + $0x70] sm:$0xff]
  %v75 = vld [vmem:[%s1 + $0x78] sm:$0xff]
  %v76 = vld [vmem:[%s1 + $0x80] sm:$0xff]
  %v77 = vld [vmem:[%s1 + $0x88] sm:$0xff]
  %v78 = vld [vmem:[%s1 + $0x90] sm:$0xff]
  %v79 = vld [vmem:[%s1 + $0x98] sm:$0xff]
  %v80 = vld [vmem:[%s1 + $0xa0] sm:$0xff]
  %v81 = vld [vmem:[%s1 + $0xa8] sm:$0xff]
  %v82 = vld [vmem:[%s1 + $0xb0] sm:$0xff]
  %v83 = vld [vmem:[%s1 + $0xb8] sm:$0xff]
  %v84 = vld [vmem:[%s1 + $0xc0] sm:$0xff]
  %v85 = vld [vmem:[%s1 + $0xc8] sm:$0xff]
  %v86 = vld [vmem:[%s1 + $0xd0] sm:$0xff]
  %v87 = vld [vmem:[%s1 + $0xd8] sm:$0xff]
  %v88 = vld [vmem:[%s1 + $0xe0] sm:$0xff]
  %v89 = vld [vmem:[%s1 + $0xe8] sm:$0xff]
  %v90 = vld [vmem:[%s1 + $0xf0] sm:$0xff]
  %v91 = vld [vmem:[%s1 + $0xf8] sm:$0xff]
  %v92 = vld [vmem:[%s1 + $0x100] sm:$0xff]
  %v93 = vld [vmem:[%s1 + $0x108] sm:$0xff]
  %v94 = vld [vmem:[%s1 + $0x110] sm:$0xff]
  %v95 = vld [vmem:[%s1 + $0x118] sm:$0xff]
  %v96 = vld [vmem:[%s1 + $0x120] sm:$0xff]
  %v97 = vld [vmem:[%s1 + $0x128] sm:$0xff]
  %v98 = vld [vmem:[%s1 + $0x130] sm:$0xff]
  %v99 = vld [vmem:[%s1 + $0x138] sm:$0xff]
  %v142 = vunpack.c.l.b16 %v18
  %v143 = vunpack.c.h.b16 %v18
  %v144 = vunpack.c.l.b16 %v19
  %v145 = vunpack.c.l.b16 %v20
  %v146 = vunpack.c.h.b16 %v20
  %v147 = vunpack.c.l.b16 %v21
  %v148 = vunpack.c.l.b16 %v22
  %v149 = vunpack.c.h.b16 %v22
  %v150 = vunpack.c.l.b16 %v23
  %v151 = vunpack.c.l.b16 %v24
  %v152 = vunpack.c.h.b16 %v24
  %v153 = vunpack.c.l.b16 %v25
  %v154 = vunpack.c.l.b16 %v26
  %v155 = vunpack.c.h.b16 %v26
  %v156 = vunpack.c.l.b16 %v27
  %v157 = vunpack.c.l.b16 %v28
  %v158 = vunpack.c.h.b16 %v28
  %v159 = vunpack.c.l.b16 %v29
  %v160 = vunpack.c.l.b16 %v30
  %v161 = vunpack.c.h.b16 %v30
  %v162 = vunpack.c.l.b16 %v31
  %v163 = vunpack.c.l.b16 %v32
  %v164 = vunpack.c.h.b16 %v32
  %v165 = vunpack.c.l.b16 %v33
  %v166 = vunpack.c.l.b16 %v34
  %v167 = vunpack.c.h.b16 %v34
  %v168 = vunpack.c.l.b16 %v35
  %v169 = vunpack.c.l.b16 %v36
  %v170 = vunpack.c.h.b16 %v36
  %v171 = vunpack.c.l.b16 %v37
  %v172 = vunpack.c.l.b16 %v38
  %v173 = vunpack.c.h.b16 %v38
  %v174 = vunpack.c.l.b16 %v39
  %v175 = vunpack.c.l.b16 %v40
  %v176 = vunpack.c.h.b16 %v40
  %v177 = vunpack.c.l.b16 %v41
  %v178 = vunpack.c.l.b16 %v42
  %v179 = vunpack.c.h.b16 %v42
  %v180 = vunpack.c.l.b16 %v43
  %v181 = vunpack.c.l.b16 %v44
  %v182 = vunpack.c.h.b16 %v44
  %v183 = vunpack.c.l.b16 %v45
  %v184 = vunpack.c.l.b16 %v46
  %v185 = vunpack.c.h.b16 %v46
  %v186 = vunpack.c.l.b16 %v47
  %v187 = vunpack.c.l.b16 %v48
  %v188 = vunpack.c.h.b16 %v48
  %v189 = vunpack.c.l.b16 %v49
  %v190 = vunpack.c.l.b16 %v50
  %v191 = vunpack.c.h.b16 %v50
  %v192 = vunpack.c.l.b16 %v51
  %v193 = vunpack.c.l.b16 %v52
  %v194 = vunpack.c.h.b16 %v52
  %v195 = vunpack.c.l.b16 %v53
  %v196 = vunpack.c.l.b16 %v54
  %v197 = vunpack.c.h.b16 %v54
  %v198 = vunpack.c.l.b16 %v55
  %v199 = vunpack.c.l.b16 %v56
  %v200 = vunpack.c.h.b16 %v56
  %v201 = vunpack.c.l.b16 %v57
  %v202 = vunpack.c.l.b16 %v58
  %v203 = vunpack.c.h.b16 %v58
  %v204 = vunpack.c.l.b16 %v59
  %v205 = vpack.c.b16 %v145, %v142
  %v206 = vpack.c.b16 %v146, %v143
  %v207 = vpack.c.b16 %v147, %v144
  %v208 = vpack.c.b16 %v151, %v148
  %v209 = vpack.c.b16 %v152, %v149
  %v210 = vpack.c.b16 %v153, %v150
  %v211 = vpack.c.b16 %v157, %v154
  %v212 = vpack.c.b16 %v158, %v155
  %v213 = vpack.c.b16 %v159, %v156
  %v214 = vpack.c.b16 %v163, %v160
  %v215 = vpack.c.b16 %v164, %v161
  %v216 = vpack.c.b16 %v165, %v162
  %v217 = vpack.c.b16 %v169, %v166
  %v218 = vpack.c.b16 %v170, %v167
  %v219 = vpack.c.b16 %v171, %v168
  %v220 = vpack.c.b16 %v175, %v172
  %v221 = vpack.c.b16 %v176, %v173
  %v222 = vpack.c.b16 %v177, %v174
  %v223 = vpack.c.b16 %v181, %v178
  %v224 = vpack.c.b16 %v182, %v179
  %v225 = vpack.c.b16 %v183, %v180
  %v226 = vpack.c.b16 %v187, %v184
  %v227 = vpack.c.b16 %v188, %v185
  %v228 = vpack.c.b16 %v189, %v186
  %v229 = vpack.c.b16 %v193, %v190
  %v230 = vpack.c.b16 %v194, %v191
  %v231 = vpack.c.b16 %v195, %v192
  %v232 = vpack.c.b16 %v199, %v196
  %v233 = vpack.c.b16 %v200, %v197
  %v234 = vpack.c.b16 %v201, %v198
  %v235 = vpack.c.b16 %v202, %v202
  %v236 = vpack.c.b16 %v203, %v203
  %v237 = vpack.c.b16 %v204, %v204
  %v300 = vunpack.c.l.b16 %v60
  %v301 = vunpack.c.h.b16 %v60
  %v302 = vunpack.c.l.b16 %v61
  %v303 = vunpack.c.h.b16 %v61
  %v304 = vunpack.c.l.b16 %v62
  %v305 = vunpack.c.h.b16 %v62
  %v306 = vunpack.c.l.b16 %v63
  %v307 = vunpack.c.h.b16 %v63
  %v308 = vunpack.c.l.b16 %v64
  %v309 = vunpack.c.h.b16 %v64
  %v310 = vunpack.c.l.b16 %v65
  %v311 = vunpack.c.h.b16 %v65
  %v312 = vunpack.c.l.b16 %v66
  %v313 = vunpack.c.h.b16 %v66
  %v314 = vunpack.c.l.b16 %v67
  %v315 = vunpack.c.h.b16 %v67
  %v316 = vunpack.c.l.b16 %v68
  %v317 = vunpack.c.h.b16 %v68
  %v318 = vunpack.c.l.b16 %v69
  %v319 = vunpack.c.h.b16 %v69
  %v320 = vunpack.c.l.b16 %v70
  %v321 = vunpack.c.h.b16 %v70
  %v322 = vunpack.c.l.b16 %v71
  %v323 = vunpack.c.h.b16 %v71
  %v324 = vunpack.c.l.b16 %v72
  %v325 = vunpack.c.h.b16 %v72
  %v326 = vunpack.c.l.b16 %v73
  %v327 = vunpack.c.h.b16 %v73
  %v328 = vunpack.c.l.b16 %v74
  %v329 = vunpack.c.h.b16 %v74
  %v330 = vunpack.c.l.b16 %v75
  %v331 = vunpack.c.h.b16 %v75
  %v332 = vunpack.c.l.b16 %v76
  %v333 = vunpack.c.h.b16 %v76
  %v334 = vunpack.c.l.b16 %v77
  %v335 = vunpack.c.h.b16 %v77
  %v336 = vunpack.c.l.b16 %v78
  %v337 = vunpack.c.h.b16 %v78
  %v338 = vunpack.c.l.b16 %v79
  %v339 = vunpack.c.h.b16 %v79
  %v340 = vunpack.c.l.b16 %v80
  %v341 = vunpack.c.h.b16 %v80
  %v342 = vunpack.c.l.b16 %v81
  %v343 = vunpack.c.h.b16 %v81
  %v344 = vunpack.c.l.b16 %v82
  %v345 = vunpack.c.h.b16 %v82
  %v346 = vunpack.c.l.b16 %v83
  %v347 = vunpack.c.h.b16 %v83
  %v348 = vunpack.c.l.b16 %v84
  %v349 = vunpack.c.h.b16 %v84
  %v350 = vunpack.c.l.b16 %v85
  %v351 = vunpack.c.h.b16 %v85
  %v352 = vunpack.c.l.b16 %v86
  %v353 = vunpack.c.h.b16 %v86
  %v354 = vunpack.c.l.b16 %v87
  %v355 = vunpack.c.h.b16 %v87
  %v356 = vunpack.c.l.b16 %v88
  %v357 = vunpack.c.h.b16 %v88
  %v358 = vunpack.c.l.b16 %v89
  %v359 = vunpack.c.h.b16 %v89
  %v360 = vunpack.c.l.b16 %v90
  %v361 = vunpack.c.h.b16 %v90
  %v362 = vunpack.c.l.b16 %v91
  %v363 = vunpack.c.h.b16 %v91
  %v364 = vunpack.c.l.b16 %v92
  %v365 = vunpack.c.h.b16 %v92
  %v366 = vunpack.c.l.b16 %v93
  %v367 = vunpack.c.h.b16 %v93
  %v368 = vunpack.c.l.b16 %v94
  %v369 = vunpack.c.h.b16 %v94
  %v370 = vunpack.c.l.b16 %v95
  %v371 = vunpack.c.h.b16 %v95
  %v372 = vunpack.c.l.b16 %v96
  %v373 = vunpack.c.h.b16 %v96
  %v374 = vunpack.c.l.b16 %v97
  %v375 = vunpack.c.h.b16 %v97
  %v376 = vunpack.c.l.b16 %v98
  %v377 = vunpack.c.h.b16 %v98
  %v378 = vunpack.c.l.b16 %v99
  %v379 = vunpack.c.h.b16 %v99
  %v380 = vpack.c.b16 %v302, %v300
  %v381 = vpack.c.b16 %v303, %v301
  %v382 = vpack.c.b16 %v306, %v304
  %v383 = vpack.c.b16 %v307, %v305
  %v384 = vpack.c.b16 %v310, %v308
  %v385 = vpack.c.b16 %v311, %v309
  %v386 = vpack.c.b16 %v314, %v312
  %v387 = vpack.c.b16 %v315, %v313
  %v388 = vpack.c.b16 %v318, %v316
  %v389 = vpack.c.b16 %v319, %v317
  %v390 = vpack.c.b16 %v322, %v320
  %v391 = vpack.c.b16 %v323, %v321
  %v392 = vpack.c.b16 %v326, %v324
  %v393 = vpack.c.b16 %v327, %v325
  %v394 = vpack.c.b16 %v330, %v328
  %v395 = vpack.c.b16 %v331, %v329
  %v396 = vpack.c.b16 %v334, %v332
  %v397 = vpack.c.b16 %v335, %v333
  %v398 = vpack.c.b16 %v338, %v336
  %v399 = vpack.c.b16 %v339, %v337
  %v400 = vpack.c.b16 %v342, %v340
  %v401 = vpack.c.b16 %v343, %v341
  %v402 = vpack.c.b16 %v346, %v344
  %v403 = vpack.c.b16 %v347, %v345
  %v404 = vpack.c.b16 %v350, %v348
  %v405 = vpack.c.b16 %v351, %v349
  %v406 = vpack.c.b16 %v354, %v352
  %v407 = vpack.c.b16 %v355, %v353
  %v408 = vpack.c.b16 %v358, %v356
  %v409 = vpack.c.b16 %v359, %v357
  %v410 = vpack.c.b16 %v362, %v360
  %v411 = vpack.c.b16 %v363, %v361
  %v412 = vpack.c.b16 %v366, %v364
  %v413 = vpack.c.b16 %v367, %v365
  %v414 = vpack.c.b16 %v370, %v368
  %v415 = vpack.c.b16 %v371, %v369
  %v416 = vpack.c.b16 %v374, %v372
  %v417 = vpack.c.b16 %v375, %v373
  %v418 = vpack.c.b16 %v378, %v376
  %v419 = vpack.c.b16 %v379, %v377
  %vm460 = vcmask 523264
  %v462 = vsel %vm460, %v207, 0
  %v465 = vsel %vm460, %v210, 0
  %v468 = vsel %vm460, %v213, 0
  %v471 = vsel %vm460, %v216, 0
  %v474 = vsel %vm460, %v219, 0
  %v477 = vsel %vm460, %v222, 0
  %v480 = vsel %vm460, %v225, 0
  %v483 = vsel %vm460, %v228, 0
  %v486 = vsel %vm460, %v231, 0
  %v489 = vsel %vm460, %v234, 0
  %v492 = vsel %vm460, %v237, 0
  %494 = vmatpush.bf16.msra.mxu0 %v394
  %495 = vmatpush.bf16.msra.mxu0 %v392
  %496 = vmatpush.bf16.msra.mxu0 %v390
  %497 = vmatpush.bf16.msra.mxu0 %v388
  %498 = vmatpush.bf16.msra.mxu0 %v386
  %499 = vmatpush.bf16.msra.mxu0 %v384
  %500 = vmatpush.bf16.msra.mxu0 %v382
  %501 = vmatpush.bf16.msra.mxu0 %v380
  %502 = vmatmul.bf16.gmra.mxu0 %v205
  %v503 = vpop.f32.mrf.mxu0
  %v504 = vadd.f32 0.0, %v503
  %v505 = vpop.f32.mrf.mxu0
  %v506 = vadd.f32 0.0, %v505
  %507 = vmatmul.bf16.gmra.mxu0 %v208
  %v508 = vpop.f32.mrf.mxu0
  %v509 = vadd.f32 0.0, %v508
  %v510 = vpop.f32.mrf.mxu0
  %v511 = vadd.f32 0.0, %v510
  %512 = vmatmul.bf16.gmra.mxu0 %v211
  %v513 = vpop.f32.mrf.mxu0
  %v514 = vadd.f32 0.0, %v513
  %v515 = vpop.f32.mrf.mxu0
  %v516 = vadd.f32 0.0, %v515
  %517 = vmatmul.bf16.gmra.mxu0 %v214
  %v518 = vpop.f32.mrf.mxu0
  %v519 = vadd.f32 0.0, %v518
  %v520 = vpop.f32.mrf.mxu0
  %v521 = vadd.f32 0.0, %v520
  %522 = vmatmul.bf16.gmra.mxu0 %v217
  %v523 = vpop.f32.mrf.mxu0
  %v524 = vadd.f32 0.0, %v523
  %v525 = vpop.f32.mrf.mxu0
  %v526 = vadd.f32 0.0, %v525
  %527 = vmatmul.bf16.gmra.mxu0 %v220
  %v528 = vpop.f32.mrf.mxu0
  %v529 = vadd.f32 0.0, %v528
  %v530 = vpop.f32.mrf.mxu0
  %v531 = vadd.f32 0.0, %v530
  %532 = vmatmul.bf16.gmra.mxu0 %v223
  %v533 = vpop.f32.mrf.mxu0
  %v534 = vadd.f32 0.0, %v533
  %v535 = vpop.f32.mrf.mxu0
  %v536 = vadd.f32 0.0, %v535
  %537 = vmatmul.bf16.gmra.mxu0 %v226
  %v538 = vpop.f32.mrf.mxu0
  %v539 = vadd.f32 0.0, %v538
  %v540 = vpop.f32.mrf.mxu0
  %v541 = vadd.f32 0.0, %v540
  %542 = vmatmul.bf16.gmra.mxu0 %v229
  %v543 = vpop.f32.mrf.mxu0
  %v544 = vadd.f32 0.0, %v543
  %v545 = vpop.f32.mrf.mxu0
  %v546 = vadd.f32 0.0, %v545
  %547 = vmatmul.bf16.gmra.mxu0 %v232
  %v548 = vpop.f32.mrf.mxu0
  %v549 = vadd.f32 0.0, %v548
  %v550 = vpop.f32.mrf.mxu0
  %v551 = vadd.f32 0.0, %v550
  %552 = vmatmul.bf16.gmra.mxu0 %v235
  %v553 = vpop.f32.mrf.mxu0
  %v554 = vadd.f32 0.0, %v553
  %v555 = vpop.f32.mrf.mxu0
  %556 = vdwg.mxu0
  %557 = vmatpush.bf16.msra.mxu0 %v410
  %558 = vmatpush.bf16.msra.mxu0 %v408
  %559 = vmatpush.bf16.msra.mxu0 %v406
  %560 = vmatpush.bf16.msra.mxu0 %v404
  %561 = vmatpush.bf16.msra.mxu0 %v402
  %562 = vmatpush.bf16.msra.mxu0 %v400
  %563 = vmatpush.bf16.msra.mxu0 %v398
  %564 = vmatpush.bf16.msra.mxu0 %v396
  %565 = vmatmul.bf16.gmra.mxu0 %v206
  %v566 = vpop.f32.mrf.mxu0
  %v567 = vadd.f32 %v504, %v566
  %v568 = vpop.f32.mrf.mxu0
  %v569 = vadd.f32 %v506, %v568
  %570 = vmatmul.bf16.gmra.mxu0 %v209
  %v571 = vpop.f32.mrf.mxu0
  %v572 = vadd.f32 %v509, %v571
  %v573 = vpop.f32.mrf.mxu0
  %v574 = vadd.f32 %v511, %v573
  %575 = vmatmul.bf16.gmra.mxu0 %v212
  %v576 = vpop.f32.mrf.mxu0
  %v577 = vadd.f32 %v514, %v576
  %v578 = vpop.f32.mrf.mxu0
  %v579 = vadd.f32 %v516, %v578
  %580 = vmatmul.bf16.gmra.mxu0 %v215
  %v581 = vpop.f32.mrf.mxu0
  %v582 = vadd.f32 %v519, %v581
  %v583 = vpop.f32.mrf.mxu0
  %v584 = vadd.f32 %v521, %v583
  %585 = vmatmul.bf16.gmra.mxu0 %v218
  %v586 = vpop.f32.mrf.mxu0
  %v587 = vadd.f32 %v524, %v586
  %v588 = vpop.f32.mrf.mxu0
  %v589 = vadd.f32 %v526, %v588
  %590 = vmatmul.bf16.gmra.mxu0 %v221
  %v591 = vpop.f32.mrf.mxu0
  %v592 = vadd.f32 %v529, %v591
  %v593 = vpop.f32.mrf.mxu0
  %v594 = vadd.f32 %v531, %v593
  %595 = vmatmul.bf16.gmra.mxu0 %v224
  %v596 = vpop.f32.mrf.mxu0
  %v597 = vadd.f32 %v534, %v596
  %v598 = vpop.f32.mrf.mxu0
  %v599 = vadd.f32 %v536, %v598
  %600 = vmatmul.bf16.gmra.mxu0 %v227
  %v601 = vpop.f32.mrf.mxu0
  %v602 = vadd.f32 %v539, %v601
  %v603 = vpop.f32.mrf.mxu0
  %v604 = vadd.f32 %v541, %v603
  %605 = vmatmul.bf16.gmra.mxu0 %v230
  %v606 = vpop.f32.mrf.mxu0
  %v607 = vadd.f32 %v544, %v606
  %v608 = vpop.f32.mrf.mxu0
  %v609 = vadd.f32 %v546, %v608
  %610 = vmatmul.bf16.gmra.mxu0 %v233
  %v611 = vpop.f32.mrf.mxu0
  %v612 = vadd.f32 %v549, %v611
  %v613 = vpop.f32.mrf.mxu0
  %v614 = vadd.f32 %v551, %v613
  %615 = vmatmul.bf16.gmra.mxu0 %v236
  %v616 = vpop.f32.mrf.mxu0
  %v617 = vadd.f32 %v554, %v616
  %v618 = vpop.f32.mrf.mxu0
  %619 = vdwg.mxu0
  %620 = vmatpush.bf16.msra.mxu0 0
  %621 = vmatpush.bf16.msra.mxu0 0
  %622 = vmatpush.bf16.msra.mxu0 0
  %623 = vmatpush.bf16.msra.mxu0 0
  %624 = vmatpush.bf16.msra.mxu0 %v418
  %625 = vmatpush.bf16.msra.mxu0 %v416
  %626 = vmatpush.bf16.msra.mxu0 %v414
  %627 = vmatpush.bf16.msra.mxu0 %v412
  %628 = vmatmul.bf16.gmra.mxu0 %v462
  %v629 = vpop.f32.mrf.mxu0
  %v630 = vadd.f32 %v567, %v629
  %v631 = vpop.f32.mrf.mxu0
  %v632 = vadd.f32 %v569, %v631
  %633 = vmatmul.bf16.gmra.mxu0 %v465
  %v634 = vpop.f32.mrf.mxu0
  %v635 = vadd.f32 %v572, %v634
  %v636 = vpop.f32.mrf.mxu0
  %v637 = vadd.f32 %v574, %v636
  %638 = vmatmul.bf16.gmra.mxu0 %v468
  %v639 = vpop.f32.mrf.mxu0
  %v640 = vadd.f32 %v577, %v639
  %v641 = vpop.f32.mrf.mxu0
  %v642 = vadd.f32 %v579, %v641
  %643 = vmatmul.bf16.gmra.mxu0 %v471
  %v644 = vpop.f32.mrf.mxu0
  %v645 = vadd.f32 %v582, %v644
  %v646 = vpop.f32.mrf.mxu0
  %v647 = vadd.f32 %v584, %v646
  %648 = vmatmul.bf16.gmra.mxu0 %v474
  %v649 = vpop.f32.mrf.mxu0
  %v650 = vadd.f32 %v587, %v649
  %v651 = vpop.f32.mrf.mxu0
  %v652 = vadd.f32 %v589, %v651
  %653 = vmatmul.bf16.gmra.mxu0 %v477
  %v654 = vpop.f32.mrf.mxu0
  %v655 = vadd.f32 %v592, %v654
  %v656 = vpop.f32.mrf.mxu0
  %v657 = vadd.f32 %v594, %v656
  %658 = vmatmul.bf16.gmra.mxu0 %v480
  %v659 = vpop.f32.mrf.mxu0
  %v660 = vadd.f32 %v597, %v659
  %v661 = vpop.f32.mrf.mxu0
  %v662 = vadd.f32 %v599, %v661
  %663 = vmatmul.bf16.gmra.mxu0 %v483
  %v664 = vpop.f32.mrf.mxu0
  %v665 = vadd.f32 %v602, %v664
  %v666 = vpop.f32.mrf.mxu0
  %v667 = vadd.f32 %v604, %v666
  %668 = vmatmul.bf16.gmra.mxu0 %v486
  %v669 = vpop.f32.mrf.mxu0
  %v670 = vadd.f32 %v607, %v669
  %v671 = vpop.f32.mrf.mxu0
  %v672 = vadd.f32 %v609, %v671
  %673 = vmatmul.bf16.gmra.mxu0 %v489
  %v674 = vpop.f32.mrf.mxu0
  %v675 = vadd.f32 %v612, %v674
  %v676 = vpop.f32.mrf.mxu0
  %v677 = vadd.f32 %v614, %v676
  %678 = vmatmul.bf16.gmra.mxu0 %v492
  %v679 = vpop.f32.mrf.mxu0
  %v680 = vadd.f32 %v617, %v679
  %v681 = vpop.f32.mrf.mxu0
  %682 = vdwg.mxu0
  %683 = vmatpush.bf16.msra.mxu0 %v395
  %684 = vmatpush.bf16.msra.mxu0 %v393
  %685 = vmatpush.bf16.msra.mxu0 %v391
  %686 = vmatpush.bf16.msra.mxu0 %v389
  %687 = vmatpush.bf16.msra.mxu0 %v387
  %688 = vmatpush.bf16.msra.mxu0 %v385
  %689 = vmatpush.bf16.msra.mxu0 %v383
  %690 = vmatpush.bf16.msra.mxu0 %v381
  %691 = vmatmul.bf16.gmra.mxu0 %v205
  %v692 = vpop.f32.mrf.mxu0
  %v693 = vadd.f32 0.0, %v692
  %v694 = vpop.f32.mrf.mxu0
  %v695 = vadd.f32 0.0, %v694
  %696 = vmatmul.bf16.gmra.mxu0 %v208
  %v697 = vpop.f32.mrf.mxu0
  %v698 = vadd.f32 0.0, %v697
  %v699 = vpop.f32.mrf.mxu0
  %v700 = vadd.f32 0.0, %v699
  %701 = vmatmul.bf16.gmra.mxu0 %v211
  %v702 = vpop.f32.mrf.mxu0
  %v703 = vadd.f32 0.0, %v702
  %v704 = vpop.f32.mrf.mxu0
  %v705 = vadd.f32 0.0, %v704
  %706 = vmatmul.bf16.gmra.mxu0 %v214
  %v707 = vpop.f32.mrf.mxu0
  %v708 = vadd.f32 0.0, %v707
  %v709 = vpop.f32.mrf.mxu0
  %v710 = vadd.f32 0.0, %v709
  %711 = vmatmul.bf16.gmra.mxu0 %v217
  %v712 = vpop.f32.mrf.mxu0
  %v713 = vadd.f32 0.0, %v712
  %v714 = vpop.f32.mrf.mxu0
  %v715 = vadd.f32 0.0, %v714
  %716 = vmatmul.bf16.gmra.mxu0 %v220
  %v717 = vpop.f32.mrf.mxu0
  %v718 = vadd.f32 0.0, %v717
  %v719 = vpop.f32.mrf.mxu0
  %v720 = vadd.f32 0.0, %v719
  %721 = vmatmul.bf16.gmra.mxu0 %v223
  %v722 = vpop.f32.mrf.mxu0
  %v723 = vadd.f32 0.0, %v722
  %v724 = vpop.f32.mrf.mxu0
  %v725 = vadd.f32 0.0, %v724
  %726 = vmatmul.bf16.gmra.mxu0 %v226
  %v727 = vpop.f32.mrf.mxu0
  %v728 = vadd.f32 0.0, %v727
  %v729 = vpop.f32.mrf.mxu0
  %v730 = vadd.f32 0.0, %v729
  %731 = vmatmul.bf16.gmra.mxu0 %v229
  %v732 = vpop.f32.mrf.mxu0
  %v733 = vadd.f32 0.0, %v732
  %v734 = vpop.f32.mrf.mxu0
  %v735 = vadd.f32 0.0, %v734
  %736 = vmatmul.bf16.gmra.mxu0 %v232
  %v737 = vpop.f32.mrf.mxu0
  %v738 = vadd.f32 0.0, %v737
  %v739 = vpop.f32.mrf.mxu0
  %v740 = vadd.f32 0.0, %v739
  %741 = vmatmul.bf16.gmra.mxu0 %v235
  %v742 = vpop.f32.mrf.mxu0
  %v743 = vadd.f32 0.0, %v742
  %v744 = vpop.f32.mrf.mxu0
  %745 = vdwg.mxu0
  %746 = vmatpush.bf16.msra.mxu0 %v411
  %747 = vmatpush.bf16.msra.mxu0 %v409
  %748 = vmatpush.bf16.msra.mxu0 %v407
  %749 = vmatpush.bf16.msra.mxu0 %v405
  %750 = vmatpush.bf16.msra.mxu0 %v403
  %751 = vmatpush.bf16.msra.mxu0 %v401
  %752 = vmatpush.bf16.msra.mxu0 %v399
  %753 = vmatpush.bf16.msra.mxu0 %v397
  %754 = vmatmul.bf16.gmra.mxu0 %v206
  %v755 = vpop.f32.mrf.mxu0
  %v756 = vadd.f32 %v693, %v755
  %v757 = vpop.f32.mrf.mxu0
  %v758 = vadd.f32 %v695, %v757
  %759 = vmatmul.bf16.gmra.mxu0 %v209
  %v760 = vpop.f32.mrf.mxu0
  %v761 = vadd.f32 %v698, %v760
  %v762 = vpop.f32.mrf.mxu0
  %v763 = vadd.f32 %v700, %v762
  %764 = vmatmul.bf16.gmra.mxu0 %v212
  %v765 = vpop.f32.mrf.mxu0
  %v766 = vadd.f32 %v703, %v765
  %v767 = vpop.f32.mrf.mxu0
  %v768 = vadd.f32 %v705, %v767
  %769 = vmatmul.bf16.gmra.mxu0 %v215
  %v770 = vpop.f32.mrf.mxu0
  %v771 = vadd.f32 %v708, %v770
  %v772 = vpop.f32.mrf.mxu0
  %v773 = vadd.f32 %v710, %v772
  %774 = vmatmul.bf16.gmra.mxu0 %v218
  %v775 = vpop.f32.mrf.mxu0
  %v776 = vadd.f32 %v713, %v775
  %v777 = vpop.f32.mrf.mxu0
  %v778 = vadd.f32 %v715, %v777
  %779 = vmatmul.bf16.gmra.mxu0 %v221
  %v780 = vpop.f32.mrf.mxu0
  %v781 = vadd.f32 %v718, %v780
  %v782 = vpop.f32.mrf.mxu0
  %v783 = vadd.f32 %v720, %v782
  %784 = vmatmul.bf16.gmra.mxu0 %v224
  %v785 = vpop.f32.mrf.mxu0
  %v786 = vadd.f32 %v723, %v785
  %v787 = vpop.f32.mrf.mxu0
  %v788 = vadd.f32 %v725, %v787
  %789 = vmatmul.bf16.gmra.mxu0 %v227
  %v790 = vpop.f32.mrf.mxu0
  %v791 = vadd.f32 %v728, %v790
  %v792 = vpop.f32.mrf.mxu0
  %v793 = vadd.f32 %v730, %v792
  %794 = vmatmul.bf16.gmra.mxu0 %v230
  %v795 = vpop.f32.mrf.mxu0
  %v796 = vadd.f32 %v733, %v795
  %v797 = vpop.f32.mrf.mxu0
  %v798 = vadd.f32 %v735, %v797
  %799 = vmatmul.bf16.gmra.mxu0 %v233
  %v800 = vpop.f32.mrf.mxu0
  %v801 = vadd.f32 %v738, %v800
  %v802 = vpop.f32.mrf.mxu0
  %v803 = vadd.f32 %v740, %v802
  %804 = vmatmul.bf16.gmra.mxu0 %v236
  %v805 = vpop.f32.mrf.mxu0
  %v806 = vadd.f32 %v743, %v805
  %v807 = vpop.f32.mrf.mxu0
  %808 = vdwg.mxu0
  %809 = vmatpush.bf16.msra.mxu0 0
  %810 = vmatpush.bf16.msra.mxu0 0
  %811 = vmatpush.bf16.msra.mxu0 0
  %812 = vmatpush.bf16.msra.mxu0 0
  %813 = vmatpush.bf16.msra.mxu0 %v419
  %814 = vmatpush.bf16.msra.mxu0 %v417
  %815 = vmatpush.bf16.msra.mxu0 %v415
  %816 = vmatpush.bf16.msra.mxu0 %v413
  %817 = vmatmul.bf16.gmra.mxu0 %v462
  %v818 = vpop.f32.mrf.mxu0
  %v819 = vadd.f32 %v756, %v818
  %v820 = vpop.f32.mrf.mxu0
  %v821 = vadd.f32 %v758, %v820
  %822 = vmatmul.bf16.gmra.mxu0 %v465
  %v823 = vpop.f32.mrf.mxu0
  %v824 = vadd.f32 %v761, %v823
  %v825 = vpop.f32.mrf.mxu0
  %v826 = vadd.f32 %v763, %v825
  %827 = vmatmul.bf16.gmra.mxu0 %v468
  %v828 = vpop.f32.mrf.mxu0
  %v829 = vadd.f32 %v766, %v828
  %v830 = vpop.f32.mrf.mxu0
  %v831 = vadd.f32 %v768, %v830
  %832 = vmatmul.bf16.gmra.mxu0 %v471
  %v833 = vpop.f32.mrf.mxu0
  %v834 = vadd.f32 %v771, %v833
  %v835 = vpop.f32.mrf.mxu0
  %v836 = vadd.f32 %v773, %v835
  %837 = vmatmul.bf16.gmra.mxu0 %v474
  %v838 = vpop.f32.mrf.mxu0
  %v839 = vadd.f32 %v776, %v838
  %v840 = vpop.f32.mrf.mxu0
  %v841 = vadd.f32 %v778, %v840
  %842 = vmatmul.bf16.gmra.mxu0 %v477
  %v843 = vpop.f32.mrf.mxu0
  %v844 = vadd.f32 %v781, %v843
  %v845 = vpop.f32.mrf.mxu0
  %v846 = vadd.f32 %v783, %v845
  %847 = vmatmul.bf16.gmra.mxu0 %v480
  %v848 = vpop.f32.mrf.mxu0
  %v849 = vadd.f32 %v786, %v848
  %v850 = vpop.f32.mrf.mxu0
  %v851 = vadd.f32 %v788, %v850
  %852 = vmatmul.bf16.gmra.mxu0 %v483
  %v853 = vpop.f32.mrf.mxu0
  %v854 = vadd.f32 %v791, %v853
  %v855 = vpop.f32.mrf.mxu0
  %v856 = vadd.f32 %v793, %v855
  %857 = vmatmul.bf16.gmra.mxu0 %v486
  %v858 = vpop.f32.mrf.mxu0
  %v859 = vadd.f32 %v796, %v858
  %v860 = vpop.f32.mrf.mxu0
  %v861 = vadd.f32 %v798, %v860
  %862 = vmatmul.bf16.gmra.mxu0 %v489
  %v863 = vpop.f32.mrf.mxu0
  %v864 = vadd.f32 %v801, %v863
  %v865 = vpop.f32.mrf.mxu0
  %v866 = vadd.f32 %v803, %v865
  %867 = vmatmul.bf16.gmra.mxu0 %v492
  %v868 = vpop.f32.mrf.mxu0
  %v869 = vadd.f32 %v806, %v868
  %v870 = vpop.f32.mrf.mxu0
  %871 = vdwg.mxu0
  %v872 = vld [vmem:[%s2] sm:$0x3]
  %v874 = vperm.slane %v872, 0
  %v875 = vperm.slane %v872, 1
  %v878 = vmul.f32 %v630, %v874
  %v879 = vmul.f32 %v819, %v875
  %v880 = vmul.f32 %v632, %v874
  %v881 = vmul.f32 %v821, %v875
  %v882 = vmul.f32 %v635, %v874
  %v883 = vmul.f32 %v824, %v875
  %v884 = vmul.f32 %v637, %v874
  %v885 = vmul.f32 %v826, %v875
  %v886 = vmul.f32 %v640, %v874
  %v887 = vmul.f32 %v829, %v875
  %v888 = vmul.f32 %v642, %v874
  %v889 = vmul.f32 %v831, %v875
  %v890 = vmul.f32 %v645, %v874
  %v891 = vmul.f32 %v834, %v875
  %v892 = vmul.f32 %v647, %v874
  %v893 = vmul.f32 %v836, %v875
  %v894 = vmul.f32 %v650, %v874
  %v895 = vmul.f32 %v839, %v875
  %v896 = vmul.f32 %v652, %v874
  %v897 = vmul.f32 %v841, %v875
  %v898 = vmul.f32 %v655, %v874
  %v899 = vmul.f32 %v844, %v875
  %v900 = vmul.f32 %v657, %v874
  %v901 = vmul.f32 %v846, %v875
  %v902 = vmul.f32 %v660, %v874
  %v903 = vmul.f32 %v849, %v875
  %v904 = vmul.f32 %v662, %v874
  %v905 = vmul.f32 %v851, %v875
  %v906 = vmul.f32 %v665, %v874
  %v907 = vmul.f32 %v854, %v875
  %v908 = vmul.f32 %v667, %v874
  %v909 = vmul.f32 %v856, %v875
  %v910 = vmul.f32 %v670, %v874
  %v911 = vmul.f32 %v859, %v875
  %v912 = vmul.f32 %v672, %v874
  %v913 = vmul.f32 %v861, %v875
  %v914 = vmul.f32 %v675, %v874
  %v915 = vmul.f32 %v864, %v875
  %v916 = vmul.f32 %v677, %v874
  %v917 = vmul.f32 %v866, %v875
  %v918 = vmul.f32 %v680, %v874
  %v919 = vmul.f32 %v869, %v875
  %v920 = vld [vmem:[%s3] sm:$0x3]
  %v922 = vperm.slane %v920, 0
  %v923 = vperm.slane %v920, 1
  %v926 = vadd.f32 %v878, %v922
  %v927 = vadd.f32 %v879, %v923
  %v928 = vadd.f32 %v880, %v922
  %v929 = vadd.f32 %v881, %v923
  %v930 = vadd.f32 %v882, %v922
  %v931 = vadd.f32 %v883, %v923
  %v932 = vadd.f32 %v884, %v922
  %v933 = vadd.f32 %v885, %v923
  %v934 = vadd.f32 %v886, %v922
  %v935 = vadd.f32 %v887, %v923
  %v936 = vadd.f32 %v888, %v922
  %v937 = vadd.f32 %v889, %v923
  %v938 = vadd.f32 %v890, %v922
  %v939 = vadd.f32 %v891, %v923
  %v940 = vadd.f32 %v892, %v922
  %v941 = vadd.f32 %v893, %v923
  %v942 = vadd.f32 %v894, %v922
  %v943 = vadd.f32 %v895, %v923
  %v944 = vadd.f32 %v896, %v922
  %v945 = vadd.f32 %v897, %v923
  %v946 = vadd.f32 %v898, %v922
  %v947 = vadd.f32 %v899, %v923
  %v948 = vadd.f32 %v900, %v922
  %v949 = vadd.f32 %v901, %v923
  %v950 = vadd.f32 %v902, %v922
  %v951 = vadd.f32 %v903, %v923
  %v952 = vadd.f32 %v904, %v922
  %v953 = vadd.f32 %v905, %v923
  %v954 = vadd.f32 %v906, %v922
  %v955 = vadd.f32 %v907, %v923
  %v956 = vadd.f32 %v908, %v922
  %v957 = vadd.f32 %v909, %v923
  %v958 = vadd.f32 %v910, %v922
  %v959 = vadd.f32 %v911, %v923
  %v960 = vadd.f32 %v912, %v922
  %v961 = vadd.f32 %v913, %v923
  %v962 = vadd.f32 %v914, %v922
  %v963 = vadd.f32 %v915, %v923
  %v964 = vadd.f32 %v916, %v922
  %v965 = vadd.f32 %v917, %v923
  %v966 = vadd.f32 %v918, %v922
  %v967 = vadd.f32 %v919, %v923
  %v968 = vmax.f32 %v926, 0.0
  %v969 = vmax.f32 %v927, 0.0
  %v970 = vmax.f32 %v928, 0.0
  %v971 = vmax.f32 %v929, 0.0
  %v972 = vmax.f32 %v930, 0.0
  %v973 = vmax.f32 %v931, 0.0
  %v974 = vmax.f32 %v932, 0.0
  %v975 = vmax.f32 %v933, 0.0
  %v976 = vmax.f32 %v934, 0.0
  %v977 = vmax.f32 %v935, 0.0
  %v978 = vmax.f32 %v936, 0.0
  %v979 = vmax.f32 %v937, 0.0
  %v980 = vmax.f32 %v938, 0.0
  %v981 = vmax.f32 %v939, 0.0
  %v982 = vmax.f32 %v940, 0.0
  %v983 = vmax.f32 %v941, 0.0
  %v984 = vmax.f32 %v942, 0.0
  %v985 = vmax.f32 %v943, 0.0
  %v986 = vmax.f32 %v944, 0.0
  %v987 = vmax.f32 %v945, 0.0
  %v988 = vmax.f32 %v946, 0.0
  %v989 = vmax.f32 %v947, 0.0
  %v990 = vmax.f32 %v948, 0.0
  %v991 = vmax.f32 %v949, 0.0
  %v992 = vmax.f32 %v950, 0.0
  %v993 = vmax.f32 %v951, 0.0
  %v994 = vmax.f32 %v952, 0.0
  %v995 = vmax.f32 %v953, 0.0
  %v996 = vmax.f32 %v954, 0.0
  %v997 = vmax.f32 %v955, 0.0
  %v998 = vmax.f32 %v956, 0.0
  %v999 = vmax.f32 %v957, 0.0
  %v1000 = vmax.f32 %v958, 0.0
  %v1001 = vmax.f32 %v959, 0.0
  %v1002 = vmax.f32 %v960, 0.0
  %v1003 = vmax.f32 %v961, 0.0
  %v1004 = vmax.f32 %v962, 0.0
  %v1005 = vmax.f32 %v963, 0.0
  %v1006 = vmax.f32 %v964, 0.0
  %v1007 = vmax.f32 %v965, 0.0
  %v1008 = vmax.f32 %v966, 0.0
  %v1009 = vmax.f32 %v967, 0.0
  %1010 = vst [vmem:[%s4] sm:$0xff] %v968
  %1011 = vst [vmem:[%s4 + $0x8] sm:$0xff] %v969
  %1012 = vst [vmem:[%s4 + $0x10] sm:$0xff] %v970
  %1013 = vst [vmem:[%s4 + $0x18] sm:$0xff] %v971
  %1014 = vst [vmem:[%s4 + $0x20] sm:$0xff] %v972
  %1015 = vst [vmem:[%s4 + $0x28] sm:$0xff] %v973
  %1016 = vst [vmem:[%s4 + $0x30] sm:$0xff] %v974
  %1017 = vst [vmem:[%s4 + $0x38] sm:$0xff] %v975
  %1018 = vst [vmem:[%s4 + $0x40] sm:$0xff] %v976
  %1019 = vst [vmem:[%s4 + $0x48] sm:$0xff] %v977
  %1020 = vst [vmem:[%s4 + $0x50] sm:$0xff] %v978
  %1021 = vst [vmem:[%s4 + $0x58] sm:$0xff] %v979
  %1022 = vst [vmem:[%s4 + $0x60] sm:$0xff] %v980
  %1023 = vst [vmem:[%s4 + $0x68] sm:$0xff] %v981
  %1024 = vst [vmem:[%s4 + $0x70] sm:$0xff] %v982
  %1025 = vst [vmem:[%s4 + $0x78] sm:$0xff] %v983
  %1026 = vst [vmem:[%s4 + $0x80] sm:$0xff] %v984
  %1027 = vst [vmem:[%s4 + $0x88] sm:$0xff] %v985
  %1028 = vst [vmem:[%s4 + $0x90] sm:$0xff] %v986
  %1029 = vst [vmem:[%s4 + $0x98] sm:$0xff] %v987
  %1030 = vst [vmem:[%s4 + $0xa0] sm:$0xff] %v988
  %1031 = vst [vmem:[%s4 + $0xa8] sm:$0xff] %v989
  %1032 = vst [vmem:[%s4 + $0xb0] sm:$0xff] %v990
  %1033 = vst [vmem:[%s4 + $0xb8] sm:$0xff] %v991
  %1034 = vst [vmem:[%s4 + $0xc0] sm:$0xff] %v992
  %1035 = vst [vmem:[%s4 + $0xc8] sm:$0xff] %v993
  %1036 = vst [vmem:[%s4 + $0xd0] sm:$0xff] %v994
  %1037 = vst [vmem:[%s4 + $0xd8] sm:$0xff] %v995
  %1038 = vst [vmem:[%s4 + $0xe0] sm:$0xff] %v996
  %1039 = vst [vmem:[%s4 + $0xe8] sm:$0xff] %v997
  %1040 = vst [vmem:[%s4 + $0xf0] sm:$0xff] %v998
  %1041 = vst [vmem:[%s4 + $0xf8] sm:$0xff] %v999
  %1042 = vst [vmem:[%s4 + $0x100] sm:$0xff] %v1000
  %1043 = vst [vmem:[%s4 + $0x108] sm:$0xff] %v1001
  %1044 = vst [vmem:[%s4 + $0x110] sm:$0xff] %v1002
  %1045 = vst [vmem:[%s4 + $0x118] sm:$0xff] %v1003
  %1046 = vst [vmem:[%s4 + $0x120] sm:$0xff] %v1004
  %1047 = vst [vmem:[%s4 + $0x128] sm:$0xff] %v1005
  %1048 = vst [vmem:[%s4 + $0x130] sm:$0xff] %v1006
  %1049 = vst [vmem:[%s4 + $0x138] sm:$0xff] %v1007
  %1050 = vst [vmem:[%s4 + $0x140] sm:$0xff] %v1008
  %1051 = vst [vmem:[%s4 + $0x148] sm:$0xff] %v1009
  // Predicated region
  $region18: #{mixed_b_forward.3} parent=0 // pred_check
    _
  $region19: #{mixed_b_forward.3} parent=0 // pred_check_branch
    %1053 = sbr.rel (0) target = $region21
  $region20: #{mixed_b_forward.3} parent=0 // pred_region
    _
  $region21: #{mixed_b_forward.3} parent=0 // pred_fallthru
    _
  // Predicated region
  $region22: #{mixed_b_forward.3} parent=0 // pred_check
    _
  $region23: #{mixed_b_forward.3} parent=0 // pred_check_branch
    %1055 = sbr.rel (0) target = $region25
  $region24: #{mixed_b_forward.3} parent=0 // pred_region
    _
  $region25: #{mixed_b_forward.3} parent=0 // pred_fallthru
    _

// kernel: mixed_b_forward.4
$region0: #{mixed_b_forward.4}
  #allocation0 [shape = 'u32[]', space=smem, size = 0x4, offset = 0x4, fixed_abs, tag = 'smem constant byte address 0x4 - core index']
  #allocation1 [shape = 'u32[72,128]{1,0:T(1,128)}', space=vmem, size = 0x9000, scoped, tag = 'internal scratch']
  %s0 = inlined_call_operand.vmem [shape: bf16[168,2304], index: 0, kind: input, shape index: {}]
  %s1 = inlined_call_operand.vmem [shape: bf16[2304,256], index: 1, kind: input, shape index: {}]
  %s2 = inlined_call_operand.vmem [shape: f32[1,256], index: 2, kind: input, shape index: {}]
  %s3 = inlined_call_operand.vmem [shape: f32[1,256], index: 3, kind: input, shape index: {}]
  %s4 = inlined_call_operand.vmem [shape: f32[168,256], index: 4, kind: output, shape index: {}]
  %s5 = sld [smem:[#allocation0]]
  $region26: #{mixed_b_forward.4} parent=0
    _
  %s7 = ssub.s32 1, %s5
  %s8 = scalar_select 0, %s7, %s5
  // Predicated region
  $region2: #{mixed_b_forward.4} parent=0 // pred_check
    _
  $region3: #{mixed_b_forward.4} parent=0 // pred_check_branch
    %10 = sbr.rel (0) target = $region5
  $region4: #{mixed_b_forward.4} parent=0 // pred_region
    _
  $region5: #{mixed_b_forward.4} parent=0 // pred_fallthru
    _
  // Predicated region
  $region6: #{mixed_b_forward.4} parent=0 // pred_check
    _
  $region7: #{mixed_b_forward.4} parent=0 // pred_check_branch
    %12 = sbr.rel (0) target = $region9
  $region8: #{mixed_b_forward.4} parent=0 // pred_region
    _
  $region9: #{mixed_b_forward.4} parent=0 // pred_fallthru
    _
  // Predicated region
  $region10: #{mixed_b_forward.4} parent=0 // pred_check
    _
  $region11: #{mixed_b_forward.4} parent=0 // pred_check_branch
    %14 = sbr.rel (0) target = $region13
  $region12: #{mixed_b_forward.4} parent=0 // pred_region
    _
  $region13: #{mixed_b_forward.4} parent=0 // pred_fallthru
    _
  // Predicated region
  $region14: #{mixed_b_forward.4} parent=0 // pred_check
    _
  $region15: #{mixed_b_forward.4} parent=0 // pred_check_branch
    %16 = sbr.rel (0) target = $region17
  $region16: #{mixed_b_forward.4} parent=0 // pred_region
    _
  $region17: #{mixed_b_forward.4} parent=0 // pred_fallthru
    _
  %v17 = vld [vmem:[%s0] sm:$0xff]
  %v18 = vld [vmem:[%s0 + $0x8] sm:$0xff]
  %v19 = vld [vmem:[%s0 + $0x10] sm:$0xff]
  %v20 = vld [vmem:[%s0 + $0x18] sm:$0xff]
  %v21 = vld [vmem:[%s0 + $0x20] sm:$0xff]
  %v22 = vld [vmem:[%s0 + $0x28] sm:$0xff]
  %v23 = vld [vmem:[%s0 + $0x30] sm:$0xff]
  %v24 = vld [vmem:[%s0 + $0x38] sm:$0xff]
  %v25 = vld [vmem:[%s0 + $0x40] sm:$0xff]
  %v26 = vld [vmem:[%s0 + $0x48] sm:$0xff]
  %v27 = vld [vmem:[%s0 + $0x50] sm:$0xff]
  %v28 = vld [vmem:[%s0 + $0x58] sm:$0xff]
  %v29 = vld [vmem:[%s0 + $0x60] sm:$0xff]
  %v30 = vld [vmem:[%s0 + $0x68] sm:$0xff]
  %v31 = vld [vmem:[%s0 + $0x70] sm:$0xff]
  %v32 = vld [vmem:[%s0 + $0x78] sm:$0xff]
  %v33 = vld [vmem:[%s0 + $0x80] sm:$0xff]
  %v34 = vld [vmem:[%s0 + $0x88] sm:$0xff]
  %v35 = vld [vmem:[%s0 + $0x90] sm:$0xff]
  %v36 = vld [vmem:[%s0 + $0x98] sm:$0xff]
  %v37 = vld [vmem:[%s0 + $0xa0] sm:$0xff]
  %v38 = vld [vmem:[%s0 + $0xa8] sm:$0xff]
  %v39 = vld [vmem:[%s0 + $0xb0] sm:$0xff]
  %v40 = vld [vmem:[%s0 + $0xb8] sm:$0xff]
  %v41 = vld [vmem:[%s0 + $0xc0] sm:$0xff]
  %v42 = vld [vmem:[%s0 + $0xc8] sm:$0xff]
  %v43 = vld [vmem:[%s0 + $0xd0] sm:$0xff]
  %v44 = vld [vmem:[%s0 + $0xd8] sm:$0xff]
  %v45 = vld [vmem:[%s0 + $0xe0] sm:$0xff]
  %v46 = vld [vmem:[%s0 + $0xe8] sm:$0xff]
  %v47 = vld [vmem:[%s0 + $0xf0] sm:$0xff]
  %v48 = vld [vmem:[%s0 + $0xf8] sm:$0xff]
  %v49 = vld [vmem:[%s0 + $0x100] sm:$0xff]
  %v50 = vld [vmem:[%s0 + $0x108] sm:$0xff]
  %v51 = vld [vmem:[%s0 + $0x110] sm:$0xff]
  %v52 = vld [vmem:[%s0 + $0x118] sm:$0xff]
  %v53 = vld [vmem:[%s0 + $0x120] sm:$0xff]
  %v54 = vld [vmem:[%s0 + $0x128] sm:$0xff]
  %v55 = vld [vmem:[%s0 + $0x130] sm:$0xff]
  %v56 = vld [vmem:[%s0 + $0x138] sm:$0xff]
  %v57 = vld [vmem:[%s0 + $0x140] sm:$0xff]
  %v58 = vld [vmem:[%s0 + $0x148] sm:$0xff]
  %v59 = vld [vmem:[%s0 + $0x150] sm:$0xff]
  %v60 = vld [vmem:[%s0 + $0x158] sm:$0xff]
  %v61 = vld [vmem:[%s0 + $0x160] sm:$0xff]
  %v62 = vld [vmem:[%s0 + $0x168] sm:$0xff]
  %v63 = vld [vmem:[%s0 + $0x170] sm:$0xff]
  %v64 = vld [vmem:[%s0 + $0x178] sm:$0xff]
  %v65 = vld [vmem:[%s0 + $0x180] sm:$0xff]
  %v66 = vld [vmem:[%s0 + $0x188] sm:$0xff]
  %v67 = vld [vmem:[%s0 + $0x190] sm:$0xff]
  %v68 = vld [vmem:[%s0 + $0x198] sm:$0xff]
  %v69 = vld [vmem:[%s0 + $0x1a0] sm:$0xff]
  %v70 = vld [vmem:[%s0 + $0x1a8] sm:$0xff]
  %v71 = vld [vmem:[%s0 + $0x1b0] sm:$0xff]
  %v72 = vld [vmem:[%s0 + $0x1b8] sm:$0xff]
  %v73 = vld [vmem:[%s0 + $0x1c0] sm:$0xff]
  %v74 = vld [vmem:[%s0 + $0x1c8] sm:$0xff]
  %v75 = vld [vmem:[%s0 + $0x1d0] sm:$0xff]
  %v76 = vld [vmem:[%s0 + $0x1d8] sm:$0xff]
  %v77 = vld [vmem:[%s0 + $0x1e0] sm:$0xff]
  %v78 = vld [vmem:[%s0 + $0x1e8] sm:$0xff]
  %v79 = vld [vmem:[%s0 + $0x1f0] sm:$0xff]
  %v80 = vld [vmem:[%s0 + $0x1f8] sm:$0xff]
  %v81 = vld [vmem:[%s0 + $0x200] sm:$0xff]
  %v82 = vld [vmem:[%s0 + $0x208] sm:$0xff]
  %v83 = vld [vmem:[%s0 + $0x210] sm:$0xff]
  %v84 = vld [vmem:[%s0 + $0x218] sm:$0xff]
  %v85 = vld [vmem:[%s0 + $0x220] sm:$0xff]
  %v86 = vld [vmem:[%s0 + $0x228] sm:$0xff]
  %v87 = vld [vmem:[%s0 + $0x230] sm:$0xff]
  %v88 = vld [vmem:[%s0 + $0x238] sm:$0xff]
  %v89 = vld [vmem:[%s0 + $0x240] sm:$0xff]
  %v90 = vld [vmem:[%s0 + $0x248] sm:$0xff]
  %v91 = vld [vmem:[%s0 + $0x250] sm:$0xff]
  %v92 = vld [vmem:[%s0 + $0x258] sm:$0xff]
  %v93 = vld [vmem:[%s0 + $0x260] sm:$0xff]
  %v94 = vld [vmem:[%s0 + $0x268] sm:$0xff]
  %v95 = vld [vmem:[%s0 + $0x270] sm:$0xff]
  %v96 = vld [vmem:[%s0 + $0x278] sm:$0xff]
  %v97 = vld [vmem:[%s0 + $0x280] sm:$0xff]
  %v98 = vld [vmem:[%s0 + $0x288] sm:$0xff]
  %v99 = vld [vmem:[%s0 + $0x290] sm:$0xff]
  %v100 = vld [vmem:[%s0 + $0x298] sm:$0xff]
  %v101 = vld [vmem:[%s0 + $0x2a0] sm:$0xff]
  %v102 = vld [vmem:[%s0 + $0x2a8] sm:$0xff]
  %v103 = vld [vmem:[%s0 + $0x2b0] sm:$0xff]
  %v104 = vld [vmem:[%s0 + $0x2b8] sm:$0xff]
  %v105 = vld [vmem:[%s0 + $0x2c0] sm:$0xff]
  %v106 = vld [vmem:[%s0 + $0x2c8] sm:$0xff]
  %v107 = vld [vmem:[%s0 + $0x2d0] sm:$0xff]
  %v108 = vld [vmem:[%s0 + $0x2d8] sm:$0xff]
  %v109 = vld [vmem:[%s0 + $0x2e0] sm:$0xff]
  %v110 = vld [vmem:[%s0 + $0x2e8] sm:$0xff]
  %v111 = vld [vmem:[%s0 + $0x2f0] sm:$0xff]
  %v112 = vld [vmem:[%s0 + $0x2f8] sm:$0xff]
  %v113 = vld [vmem:[%s0 + $0x300] sm:$0xff]
  %v114 = vld [vmem:[%s0 + $0x308] sm:$0xff]
  %v115 = vld [vmem:[%s0 + $0x310] sm:$0xff]
  %v116 = vld [vmem:[%s0 + $0x318] sm:$0xff]
  %v117 = vld [vmem:[%s0 + $0x320] sm:$0xff]
  %v118 = vld [vmem:[%s0 + $0x328] sm:$0xff]
  %v119 = vld [vmem:[%s0 + $0x330] sm:$0xff]
  %v120 = vld [vmem:[%s0 + $0x338] sm:$0xff]
  %v121 = vld [vmem:[%s0 + $0x340] sm:$0xff]
  %v122 = vld [vmem:[%s0 + $0x348] sm:$0xff]
  %v123 = vld [vmem:[%s0 + $0x350] sm:$0xff]
  %v124 = vld [vmem:[%s0 + $0x358] sm:$0xff]
  %v125 = vld [vmem:[%s0 + $0x360] sm:$0xff]
  %v126 = vld [vmem:[%s0 + $0x368] sm:$0xff]
  %v127 = vld [vmem:[%s0 + $0x370] sm:$0xff]
  %v128 = vld [vmem:[%s0 + $0x378] sm:$0xff]
  %v129 = vld [vmem:[%s0 + $0x380] sm:$0xff]
  %v130 = vld [vmem:[%s0 + $0x388] sm:$0xff]
  %v131 = vld [vmem:[%s0 + $0x390] sm:$0xff]
  %v132 = vld [vmem:[%s0 + $0x398] sm:$0xff]
  %v133 = vld [vmem:[%s0 + $0x3a0] sm:$0xff]
  %v134 = vld [vmem:[%s0 + $0x3a8] sm:$0xff]
  %v135 = vld [vmem:[%s0 + $0x3b0] sm:$0xff]
  %v136 = vld [vmem:[%s0 + $0x3b8] sm:$0xff]
  %v137 = vld [vmem:[%s0 + $0x3c0] sm:$0xff]
  %v138 = vld [vmem:[%s0 + $0x3c8] sm:$0xff]
  %v139 = vld [vmem:[%s0 + $0x3d0] sm:$0xff]
  %v140 = vld [vmem:[%s0 + $0x3d8] sm:$0xff]
  %v141 = vld [vmem:[%s0 + $0x3e0] sm:$0xff]
  %v142 = vld [vmem:[%s0 + $0x3e8] sm:$0xff]
  %v143 = vld [vmem:[%s0 + $0x3f0] sm:$0xff]
  %v144 = vld [vmem:[%s0 + $0x3f8] sm:$0xff]
  %v145 = vld [vmem:[%s0 + $0x400] sm:$0xff]
  %v146 = vld [vmem:[%s0 + $0x408] sm:$0xff]
  %v147 = vld [vmem:[%s0 + $0x410] sm:$0xff]
  %v148 = vld [vmem:[%s0 + $0x418] sm:$0xff]
  %v149 = vld [vmem:[%s0 + $0x420] sm:$0xff]
  %v150 = vld [vmem:[%s0 + $0x428] sm:$0xff]
  %v151 = vld [vmem:[%s0 + $0x430] sm:$0xff]
  %v152 = vld [vmem:[%s0 + $0x438] sm:$0xff]
  %v153 = vld [vmem:[%s0 + $0x440] sm:$0xff]
  %v154 = vld [vmem:[%s0 + $0x448] sm:$0xff]
  %v155 = vld [vmem:[%s0 + $0x450] sm:$0xff]
  %v156 = vld [vmem:[%s0 + $0x458] sm:$0xff]
  %v157 = vld [vmem:[%s0 + $0x460] sm:$0xff]
  %v158 = vld [vmem:[%s0 + $0x468] sm:$0xff]
  %v159 = vld [vmem:[%s0 + $0x470] sm:$0xff]
  %v160 = vld [vmem:[%s0 + $0x478] sm:$0xff]
  %v161 = vld [vmem:[%s0 + $0x480] sm:$0xff]
  %v162 = vld [vmem:[%s0 + $0x488] sm:$0xff]
  %v163 = vld [vmem:[%s0 + $0x490] sm:$0xff]
  %v164 = vld [vmem:[%s0 + $0x498] sm:$0xff]
  %v165 = vld [vmem:[%s0 + $0x4a0] sm:$0xff]
  %v166 = vld [vmem:[%s0 + $0x4a8] sm:$0xff]
  %v167 = vld [vmem:[%s0 + $0x4b0] sm:$0xff]
  %v168 = vld [vmem:[%s0 + $0x4b8] sm:$0xff]
  %v169 = vld [vmem:[%s0 + $0x4c0] sm:$0xff]
  %v170 = vld [vmem:[%s0 + $0x4c8] sm:$0xff]
  %v171 = vld [vmem:[%s0 + $0x4d0] sm:$0xff]
  %v172 = vld [vmem:[%s0 + $0x4d8] sm:$0xff]
  %v173 = vld [vmem:[%s0 + $0x4e0] sm:$0xff]
  %v174 = vld [vmem:[%s0 + $0x4e8] sm:$0xff]
  %v175 = vld [vmem:[%s0 + $0x4f0] sm:$0xff]
  %v176 = vld [vmem:[%s0 + $0x4f8] sm:$0xff]
  %v177 = vld [vmem:[%s0 + $0x500] sm:$0xff]
  %v178 = vld [vmem:[%s0 + $0x508] sm:$0xff]
  %v179 = vld [vmem:[%s0 + $0x510] sm:$0xff]
  %v180 = vld [vmem:[%s0 + $0x518] sm:$0xff]
  %v181 = vld [vmem:[%s0 + $0x520] sm:$0xff]
  %v182 = vld [vmem:[%s0 + $0x528] sm:$0xff]
  %v183 = vld [vmem:[%s0 + $0x530] sm:$0xff]
  %v184 = vld [vmem:[%s0 + $0x538] sm:$0xff]
  %v185 = vld [vmem:[%s0 + $0x540] sm:$0xff]
  %v186 = vld [vmem:[%s0 + $0x548] sm:$0xff]
  %v187 = vld [vmem:[%s0 + $0x550] sm:$0xff]
  %v188 = vld [vmem:[%s0 + $0x558] sm:$0xff]
  %v189 = vld [vmem:[%s0 + $0x560] sm:$0xff]
  %v190 = vld [vmem:[%s0 + $0x568] sm:$0xff]
  %v191 = vld [vmem:[%s0 + $0x570] sm:$0xff]
  %v192 = vld [vmem:[%s0 + $0x578] sm:$0xff]
  %v193 = vld [vmem:[%s0 + $0x580] sm:$0xff]
  %v194 = vld [vmem:[%s0 + $0x588] sm:$0xff]
  %v195 = vld [vmem:[%s0 + $0x590] sm:$0xff]
  %v196 = vld [vmem:[%s0 + $0x598] sm:$0xff]
  %v197 = vld [vmem:[%s0 + $0x5a0] sm:$0xff]
  %v198 = vld [vmem:[%s0 + $0x5a8] sm:$0xff]
  %v199 = vld [vmem:[%s0 + $0x5b0] sm:$0xff]
  %v200 = vld [vmem:[%s0 + $0x5b8] sm:$0xff]
  %v201 = vld [vmem:[%s0 + $0x5c0] sm:$0xff]
  %v202 = vld [vmem:[%s0 + $0x5c8] sm:$0xff]
  %v203 = vld [vmem:[%s0 + $0x5d0] sm:$0xff]
  %v204 = vld [vmem:[%s0 + $0x5d8] sm:$0xff]
  %v205 = vld [vmem:[%s0 + $0x5e0] sm:$0xff]
  %v206 = vld [vmem:[%s1] sm:$0xff]
  %v207 = vld [vmem:[%s1 + $0x8] sm:$0xff]
  %v208 = vld [vmem:[%s1 + $0x10] sm:$0xff]
  %v209 = vld [vmem:[%s1 + $0x18] sm:$0xff]
  %v210 = vld [vmem:[%s1 + $0x20] sm:$0xff]
  %v211 = vld [vmem:[%s1 + $0x28] sm:$0xff]
  %v212 = vld [vmem:[%s1 + $0x30] sm:$0xff]
  %v213 = vld [vmem:[%s1 + $0x38] sm:$0xff]
  %v214 = vld [vmem:[%s1 + $0x40] sm:$0xff]
  %v215 = vld [vmem:[%s1 + $0x48] sm:$0xff]
  %v216 = vld [vmem:[%s1 + $0x50] sm:$0xff]
  %v217 = vld [vmem:[%s1 + $0x58] sm:$0xff]
  %v218 = vld [vmem:[%s1 + $0x60] sm:$0xff]
  %v219 = vld [vmem:[%s1 + $0x68] sm:$0xff]
  %v220 = vld [vmem:[%s1 + $0x70] sm:$0xff]
  %v221 = vld [vmem:[%s1 + $0x78] sm:$0xff]
  %v222 = vld [vmem:[%s1 + $0x80] sm:$0xff]
  %v223 = vld [vmem:[%s1 + $0x88] sm:$0xff]
  %v224 = vld [vmem:[%s1 + $0x90] sm:$0xff]
  %v225 = vld [vmem:[%s1 + $0x98] sm:$0xff]
  %v226 = vld [vmem:[%s1 + $0xa0] sm:$0xff]
  %v227 = vld [vmem:[%s1 + $0xa8] sm:$0xff]
  %v228 = vld [vmem:[%s1 + $0xb0] sm:$0xff]
  %v229 = vld [vmem:[%s1 + $0xb8] sm:$0xff]
  %v230 = vld [vmem:[%s1 + $0xc0] sm:$0xff]
  %v231 = vld [vmem:[%s1 + $0xc8] sm:$0xff]
  %v232 = vld [vmem:[%s1 + $0xd0] sm:$0xff]
  %v233 = vld [vmem:[%s1 + $0xd8] sm:$0xff]
  %v234 = vld [vmem:[%s1 + $0xe0] sm:$0xff]
  %v235 = vld [vmem:[%s1 + $0xe8] sm:$0xff]
  %v236 = vld [vmem:[%s1 + $0xf0] sm:$0xff]
  %v237 = vld [vmem:[%s1 + $0xf8] sm:$0xff]
  %v238 = vld [vmem:[%s1 + $0x100] sm:$0xff]
  %v239 = vld [vmem:[%s1 + $0x108] sm:$0xff]
  %v240 = vld [vmem:[%s1 + $0x110] sm:$0xff]
  %v241 = vld [vmem:[%s1 + $0x118] sm:$0xff]
  %v242 = vld [vmem:[%s1 + $0x120] sm:$0xff]
  %v243 = vld [vmem:[%s1 + $0x128] sm:$0xff]
  %v244 = vld [vmem:[%s1 + $0x130] sm:$0xff]
  %v245 = vld [vmem:[%s1 + $0x138] sm:$0xff]
  %v246 = vld [vmem:[%s1 + $0x140] sm:$0xff]
  %v247 = vld [vmem:[%s1 + $0x148] sm:$0xff]
  %v248 = vld [vmem:[%s1 + $0x150] sm:$0xff]
  %v249 = vld [vmem:[%s1 + $0x158] sm:$0xff]
  %v250 = vld [vmem:[%s1 + $0x160] sm:$0xff]
  %v251 = vld [vmem:[%s1 + $0x168] sm:$0xff]
  %v252 = vld [vmem:[%s1 + $0x170] sm:$0xff]
  %v253 = vld [vmem:[%s1 + $0x178] sm:$0xff]
  %v254 = vld [vmem:[%s1 + $0x180] sm:$0xff]
  %v255 = vld [vmem:[%s1 + $0x188] sm:$0xff]
  %v256 = vld [vmem:[%s1 + $0x190] sm:$0xff]
  %v257 = vld [vmem:[%s1 + $0x198] sm:$0xff]
  %v258 = vld [vmem:[%s1 + $0x1a0] sm:$0xff]
  %v259 = vld [vmem:[%s1 + $0x1a8] sm:$0xff]
  %v260 = vld [vmem:[%s1 + $0x1b0] sm:$0xff]
  %v261 = vld [vmem:[%s1 + $0x1b8] sm:$0xff]
  %v262 = vld [vmem:[%s1 + $0x1c0] sm:$0xff]
  %v263 = vld [vmem:[%s1 + $0x1c8] sm:$0xff]
  %v264 = vld [vmem:[%s1 + $0x1d0] sm:$0xff]
  %v265 = vld [vmem:[%s1 + $0x1d8] sm:$0xff]
  %v266 = vld [vmem:[%s1 + $0x1e0] sm:$0xff]
  %v267 = vld [vmem:[%s1 + $0x1e8] sm:$0xff]
  %v268 = vld [vmem:[%s1 + $0x1f0] sm:$0xff]
  %v269 = vld [vmem:[%s1 + $0x1f8] sm:$0xff]
  %v270 = vld [vmem:[%s1 + $0x200] sm:$0xff]
  %v271 = vld [vmem:[%s1 + $0x208] sm:$0xff]
  %v272 = vld [vmem:[%s1 + $0x210] sm:$0xff]
  %v273 = vld [vmem:[%s1 + $0x218] sm:$0xff]
  %v274 = vld [vmem:[%s1 + $0x220] sm:$0xff]
  %v275 = vld [vmem:[%s1 + $0x228] sm:$0xff]
  %v276 = vld [vmem:[%s1 + $0x230] sm:$0xff]
  %v277 = vld [vmem:[%s1 + $0x238] sm:$0xff]
  %v278 = vld [vmem:[%s1 + $0x240] sm:$0xff]
  %v279 = vld [vmem:[%s1 + $0x248] sm:$0xff]
  %v280 = vld [vmem:[%s1 + $0x250] sm:$0xff]
  %v281 = vld [vmem:[%s1 + $0x258] sm:$0xff]
  %v282 = vld [vmem:[%s1 + $0x260] sm:$0xff]
  %v283 = vld [vmem:[%s1 + $0x268] sm:$0xff]
  %v284 = vld [vmem:[%s1 + $0x270] sm:$0xff]
  %v285 = vld [vmem:[%s1 + $0x278] sm:$0xff]
  %v286 = vld [vmem:[%s1 + $0x280] sm:$0xff]
  %v287 = vld [vmem:[%s1 + $0x288] sm:$0xff]
  %v288 = vld [vmem:[%s1 + $0x290] sm:$0xff]
  %v289 = vld [vmem:[%s1 + $0x298] sm:$0xff]
  %v290 = vld [vmem:[%s1 + $0x2a0] sm:$0xff]
  %v291 = vld [vmem:[%s1 + $0x2a8] sm:$0xff]
  %v292 = vld [vmem:[%s1 + $0x2b0] sm:$0xff]
  %v293 = vld [vmem:[%s1 + $0x2b8] sm:$0xff]
  %v294 = vld [vmem:[%s1 + $0x2c0] sm:$0xff]
  %v295 = vld [vmem:[%s1 + $0x2c8] sm:$0xff]
  %v296 = vld [vmem:[%s1 + $0x2d0] sm:$0xff]
  %v297 = vld [vmem:[%s1 + $0x2d8] sm:$0xff]
  %v298 = vld [vmem:[%s1 + $0x2e0] sm:$0xff]
  %v299 = vld [vmem:[%s1 + $0x2e8] sm:$0xff]
  %v300 = vld [vmem:[%s1 + $0x2f0] sm:$0xff]
  %v301 = vld [vmem:[%s1 + $0x2f8] sm:$0xff]
  %v302 = vld [vmem:[%s1 + $0x300] sm:$0xff]
  %v303 = vld [vmem:[%s1 + $0x308] sm:$0xff]
  %v304 = vld [vmem:[%s1 + $0x310] sm:$0xff]
  %v305 = vld [vmem:[%s1 + $0x318] sm:$0xff]
  %v306 = vld [vmem:[%s1 + $0x320] sm:$0xff]
  %v307 = vld [vmem:[%s1 + $0x328] sm:$0xff]
  %v308 = vld [vmem:[%s1 + $0x330] sm:$0xff]
  %v309 = vld [vmem:[%s1 + $0x338] sm:$0xff]
  %v310 = vld [vmem:[%s1 + $0x340] sm:$0xff]
  %v311 = vld [vmem:[%s1 + $0x348] sm:$0xff]
  %v312 = vld [vmem:[%s1 + $0x350] sm:$0xff]
  %v313 = vld [vmem:[%s1 + $0x358] sm:$0xff]
  %v314 = vld [vmem:[%s1 + $0x360] sm:$0xff]
  %v315 = vld [vmem:[%s1 + $0x368] sm:$0xff]
  %v316 = vld [vmem:[%s1 + $0x370] sm:$0xff]
  %v317 = vld [vmem:[%s1 + $0x378] sm:$0xff]
  %v318 = vld [vmem:[%s1 + $0x380] sm:$0xff]
  %v319 = vld [vmem:[%s1 + $0x388] sm:$0xff]
  %v320 = vld [vmem:[%s1 + $0x390] sm:$0xff]
  %v321 = vld [vmem:[%s1 + $0x398] sm:$0xff]
  %v322 = vld [vmem:[%s1 + $0x3a0] sm:$0xff]
  %v323 = vld [vmem:[%s1 + $0x3a8] sm:$0xff]
  %v324 = vld [vmem:[%s1 + $0x3b0] sm:$0xff]
  %v325 = vld [vmem:[%s1 + $0x3b8] sm:$0xff]
  %v326 = vld [vmem:[%s1 + $0x3c0] sm:$0xff]
  %v327 = vld [vmem:[%s1 + $0x3c8] sm:$0xff]
  %v328 = vld [vmem:[%s1 + $0x3d0] sm:$0xff]
  %v329 = vld [vmem:[%s1 + $0x3d8] sm:$0xff]
  %v330 = vld [vmem:[%s1 + $0x3e0] sm:$0xff]
  %v331 = vld [vmem:[%s1 + $0x3e8] sm:$0xff]
  %v332 = vld [vmem:[%s1 + $0x3f0] sm:$0xff]
  %v333 = vld [vmem:[%s1 + $0x3f8] sm:$0xff]
  %v334 = vld [vmem:[%s1 + $0x400] sm:$0xff]
  %v335 = vld [vmem:[%s1 + $0x408] sm:$0xff]
  %v336 = vld [vmem:[%s1 + $0x410] sm:$0xff]
  %v337 = vld [vmem:[%s1 + $0x418] sm:$0xff]
  %v338 = vld [vmem:[%s1 + $0x420] sm:$0xff]
  %v339 = vld [vmem:[%s1 + $0x428] sm:$0xff]
  %v340 = vld [vmem:[%s1 + $0x430] sm:$0xff]
  %v341 = vld [vmem:[%s1 + $0x438] sm:$0xff]
  %v342 = vld [vmem:[%s1 + $0x440] sm:$0xff]
  %v343 = vld [vmem:[%s1 + $0x448] sm:$0xff]
  %v344 = vld [vmem:[%s1 + $0x450] sm:$0xff]
  %v345 = vld [vmem:[%s1 + $0x458] sm:$0xff]
  %v346 = vld [vmem:[%s1 + $0x460] sm:$0xff]
  %v347 = vld [vmem:[%s1 + $0x468] sm:$0xff]
  %v348 = vld [vmem:[%s1 + $0x470] sm:$0xff]
  %v349 = vld [vmem:[%s1 + $0x478] sm:$0xff]
  %v350 = vld [vmem:[%s1 + $0x480] sm:$0xff]
  %v351 = vld [vmem:[%s1 + $0x488] sm:$0xff]
  %v352 = vld [vmem:[%s1 + $0x490] sm:$0xff]
  %v353 = vld [vmem:[%s1 + $0x498] sm:$0xff]
  %v354 = vld [vmem:[%s1 + $0x4a0] sm:$0xff]
  %v355 = vld [vmem:[%s1 + $0x4a8] sm:$0xff]
  %v356 = vld [vmem:[%s1 + $0x4b0] sm:$0xff]
  %v357 = vld [vmem:[%s1 + $0x4b8] sm:$0xff]
  %v358 = vld [vmem:[%s1 + $0x4c0] sm:$0xff]
  %v359 = vld [vmem:[%s1 + $0x4c8] sm:$0xff]
  %v360 = vld [vmem:[%s1 + $0x4d0] sm:$0xff]
  %v361 = vld [vmem:[%s1 + $0x4d8] sm:$0xff]
  %v362 = vld [vmem:[%s1 + $0x4e0] sm:$0xff]
  %v363 = vld [vmem:[%s1 + $0x4e8] sm:$0xff]
  %v364 = vld [vmem:[%s1 + $0x4f0] sm:$0xff]
  %v365 = vld [vmem:[%s1 + $0x4f8] sm:$0xff]
  %v366 = vld [vmem:[%s1 + $0x500] sm:$0xff]
  %v367 = vld [vmem:[%s1 + $0x508] sm:$0xff]
  %v368 = vld [vmem:[%s1 + $0x510] sm:$0xff]
  %v369 = vld [vmem:[%s1 + $0x518] sm:$0xff]
  %v370 = vld [vmem:[%s1 + $0x520] sm:$0xff]
  %v371 = vld [vmem:[%s1 + $0x528] sm:$0xff]
  %v372 = vld [vmem:[%s1 + $0x530] sm:$0xff]
  %v373 = vld [vmem:[%s1 + $0x538] sm:$0xff]
  %v374 = vld [vmem:[%s1 + $0x540] sm:$0xff]
  %v375 = vld [vmem:[%s1 + $0x548] sm:$0xff]
  %v376 = vld [vmem:[%s1 + $0x550] sm:$0xff]
  %v377 = vld [vmem:[%s1 + $0x558] sm:$0xff]
  %v378 = vld [vmem:[%s1 + $0x560] sm:$0xff]
  %v379 = vld [vmem:[%s1 + $0x568] sm:$0xff]
  %v380 = vld [vmem:[%s1 + $0x570] sm:$0xff]
  %v381 = vld [vmem:[%s1 + $0x578] sm:$0xff]
  %v382 = vld [vmem:[%s1 + $0x580] sm:$0xff]
  %v383 = vld [vmem:[%s1 + $0x588] sm:$0xff]
  %v384 = vld [vmem:[%s1 + $0x590] sm:$0xff]
  %v385 = vld [vmem:[%s1 + $0x598] sm:$0xff]
  %v386 = vld [vmem:[%s1 + $0x5a0] sm:$0xff]
  %v387 = vld [vmem:[%s1 + $0x5a8] sm:$0xff]
  %v388 = vld [vmem:[%s1 + $0x5b0] sm:$0xff]
  %v389 = vld [vmem:[%s1 + $0x5b8] sm:$0xff]
  %v390 = vld [vmem:[%s1 + $0x5c0] sm:$0xff]
  %v391 = vld [vmem:[%s1 + $0x5c8] sm:$0xff]
  %v392 = vld [vmem:[%s1 + $0x5d0] sm:$0xff]
  %v393 = vld [vmem:[%s1 + $0x5d8] sm:$0xff]
  %v394 = vld [vmem:[%s1 + $0x5e0] sm:$0xff]
  %v395 = vld [vmem:[%s1 + $0x5e8] sm:$0xff]
  %v396 = vld [vmem:[%s1 + $0x5f0] sm:$0xff]
  %v397 = vld [vmem:[%s1 + $0x5f8] sm:$0xff]
  %v398 = vld [vmem:[%s1 + $0x600] sm:$0xff]
  %v399 = vld [vmem:[%s1 + $0x608] sm:$0xff]
  %v400 = vld [vmem:[%s1 + $0x610] sm:$0xff]
  %v401 = vld [vmem:[%s1 + $0x618] sm:$0xff]
  %v402 = vld [vmem:[%s1 + $0x620] sm:$0xff]
  %v403 = vld [vmem:[%s1 + $0x628] sm:$0xff]
  %v404 = vld [vmem:[%s1 + $0x630] sm:$0xff]
  %v405 = vld [vmem:[%s1 + $0x638] sm:$0xff]
  %v406 = vld [vmem:[%s1 + $0x640] sm:$0xff]
  %v407 = vld [vmem:[%s1 + $0x648] sm:$0xff]
  %v408 = vld [vmem:[%s1 + $0x650] sm:$0xff]
  %v409 = vld [vmem:[%s1 + $0x658] sm:$0xff]
  %v410 = vld [vmem:[%s1 + $0x660] sm:$0xff]
  %v411 = vld [vmem:[%s1 + $0x668] sm:$0xff]
  %v412 = vld [vmem:[%s1 + $0x670] sm:$0xff]
  %v413 = vld [vmem:[%s1 + $0x678] sm:$0xff]
  %v414 = vld [vmem:[%s1 + $0x680] sm:$0xff]
  %v415 = vld [vmem:[%s1 + $0x688] sm:$0xff]
  %v416 = vld [vmem:[%s1 + $0x690] sm:$0xff]
  %v417 = vld [vmem:[%s1 + $0x698] sm:$0xff]
  %v418 = vld [vmem:[%s1 + $0x6a0] sm:$0xff]
  %v419 = vld [vmem:[%s1 + $0x6a8] sm:$0xff]
  %v420 = vld [vmem:[%s1 + $0x6b0] sm:$0xff]
  %v421 = vld [vmem:[%s1 + $0x6b8] sm:$0xff]
  %v422 = vld [vmem:[%s1 + $0x6c0] sm:$0xff]
  %v423 = vld [vmem:[%s1 + $0x6c8] sm:$0xff]
  %v424 = vld [vmem:[%s1 + $0x6d0] sm:$0xff]
  %v425 = vld [vmem:[%s1 + $0x6d8] sm:$0xff]
  %v426 = vld [vmem:[%s1 + $0x6e0] sm:$0xff]
  %v427 = vld [vmem:[%s1 + $0x6e8] sm:$0xff]
  %v428 = vld [vmem:[%s1 + $0x6f0] sm:$0xff]
  %v429 = vld [vmem:[%s1 + $0x6f8] sm:$0xff]
  %v430 = vld [vmem:[%s1 + $0x700] sm:$0xff]
  %v431 = vld [vmem:[%s1 + $0x708] sm:$0xff]
  %v432 = vld [vmem:[%s1 + $0x710] sm:$0xff]
  %v433 = vld [vmem:[%s1 + $0x718] sm:$0xff]
  %v434 = vld [vmem:[%s1 + $0x720] sm:$0xff]
  %v435 = vld [vmem:[%s1 + $0x728] sm:$0xff]
  %v436 = vld [vmem:[%s1 + $0x730] sm:$0xff]
  %v437 = vld [vmem:[%s1 + $0x738] sm:$0xff]
  %v438 = vld [vmem:[%s1 + $0x740] sm:$0xff]
  %v439 = vld [vmem:[%s1 + $0x748] sm:$0xff]
  %v440 = vld [vmem:[%s1 + $0x750] sm:$0xff]
  %v441 = vld [vmem:[%s1 + $0x758] sm:$0xff]
  %v442 = vld [vmem:[%s1 + $0x760] sm:$0xff]
  %v443 = vld [vmem:[%s1 + $0x768] sm:$0xff]
  %v444 = vld [vmem:[%s1 + $0x770] sm:$0xff]
  %v445 = vld [vmem:[%s1 + $0x778] sm:$0xff]
  %v446 = vld [vmem:[%s1 + $0x780] sm:$0xff]
  %v447 = vld [vmem:[%s1 + $0x788] sm:$0xff]
  %v448 = vld [vmem:[%s1 + $0x790] sm:$0xff]
  %v449 = vld [vmem:[%s1 + $0x798] sm:$0xff]
  %v450 = vld [vmem:[%s1 + $0x7a0] sm:$0xff]
  %v451 = vld [vmem:[%s1 + $0x7a8] sm:$0xff]
  %v452 = vld [vmem:[%s1 + $0x7b0] sm:$0xff]
  %v453 = vld [vmem:[%s1 + $0x7b8] sm:$0xff]
  %v454 = vld [vmem:[%s1 + $0x7c0] sm:$0xff]
  %v455 = vld [vmem:[%s1 + $0x7c8] sm:$0xff]
  %v456 = vld [vmem:[%s1 + $0x7d0] sm:$0xff]
  %v457 = vld [vmem:[%s1 + $0x7d8] sm:$0xff]
  %v458 = vld [vmem:[%s1 + $0x7e0] sm:$0xff]
  %v459 = vld [vmem:[%s1 + $0x7e8] sm:$0xff]
  %v460 = vld [vmem:[%s1 + $0x7f0] sm:$0xff]
  %v461 = vld [vmem:[%s1 + $0x7f8] sm:$0xff]
  %v462 = vld [vmem:[%s1 + $0x800] sm:$0xff]
  %v463 = vld [vmem:[%s1 + $0x808] sm:$0xff]
  %v464 = vld [vmem:[%s1 + $0x810] sm:$0xff]
  %v465 = vld [vmem:[%s1 + $0x818] sm:$0xff]
  %v466 = vld [vmem:[%s1 + $0x820] sm:$0xff]
  %v467 = vld [vmem:[%s1 + $0x828] sm:$0xff]
  %v468 = vld [vmem:[%s1 + $0x830] sm:$0xff]
  %v469 = vld [vmem:[%s1 + $0x838] sm:$0xff]
  %v470 = vld [vmem:[%s1 + $0x840] sm:$0xff]
  %v471 = vld [vmem:[%s1 + $0x848] sm:$0xff]
  %v472 = vld [vmem:[%s1 + $0x850] sm:$0xff]
  %v473 = vld [vmem:[%s1 + $0x858] sm:$0xff]
  %v474 = vld [vmem:[%s1 + $0x860] sm:$0xff]
  %v475 = vld [vmem:[%s1 + $0x868] sm:$0xff]
  %v476 = vld [vmem:[%s1 + $0x870] sm:$0xff]
  %v477 = vld [vmem:[%s1 + $0x878] sm:$0xff]
  %v478 = vld [vmem:[%s1 + $0x880] sm:$0xff]
  %v479 = vld [vmem:[%s1 + $0x888] sm:$0xff]
  %v480 = vld [vmem:[%s1 + $0x890] sm:$0xff]
  %v481 = vld [vmem:[%s1 + $0x898] sm:$0xff]
  %v482 = vld [vmem:[%s1 + $0x8a0] sm:$0xff]
  %v483 = vld [vmem:[%s1 + $0x8a8] sm:$0xff]
  %v484 = vld [vmem:[%s1 + $0x8b0] sm:$0xff]
  %v485 = vld [vmem:[%s1 + $0x8b8] sm:$0xff]
  %v486 = vld [vmem:[%s1 + $0x8c0] sm:$0xff]
  %v487 = vld [vmem:[%s1 + $0x8c8] sm:$0xff]
  %v488 = vld [vmem:[%s1 + $0x8d0] sm:$0xff]
  %v489 = vld [vmem:[%s1 + $0x8d8] sm:$0xff]
  %v490 = vld [vmem:[%s1 + $0x8e0] sm:$0xff]
  %v491 = vld [vmem:[%s1 + $0x8e8] sm:$0xff]
  %v492 = vld [vmem:[%s1 + $0x8f0] sm:$0xff]
  %v493 = vld [vmem:[%s1 + $0x8f8] sm:$0xff]
  %v683 = vunpack.c.l.b16 %v17
  %v684 = vunpack.c.h.b16 %v17
  %v685 = vunpack.c.l.b16 %v18
  %v686 = vunpack.c.h.b16 %v18
  %v687 = vunpack.c.l.b16 %v19
  %v688 = vunpack.c.h.b16 %v19
  %v689 = vunpack.c.l.b16 %v20
  %v690 = vunpack.c.h.b16 %v20
  %v691 = vunpack.c.l.b16 %v21
  %v692 = vunpack.c.h.b16 %v21
  %v693 = vunpack.c.l.b16 %v22
  %v694 = vunpack.c.h.b16 %v22
  %v695 = vunpack.c.l.b16 %v23
  %v696 = vunpack.c.h.b16 %v23
  %v697 = vunpack.c.l.b16 %v24
  %v698 = vunpack.c.h.b16 %v24
  %v699 = vunpack.c.l.b16 %v25
  %v700 = vunpack.c.h.b16 %v25
  %v701 = vunpack.c.l.b16 %v26
  %v702 = vunpack.c.h.b16 %v26
  %v703 = vunpack.c.l.b16 %v27
  %v704 = vunpack.c.h.b16 %v27
  %v705 = vunpack.c.l.b16 %v28
  %v706 = vunpack.c.h.b16 %v28
  %v707 = vunpack.c.l.b16 %v29
  %v708 = vunpack.c.h.b16 %v29
  %v709 = vunpack.c.l.b16 %v30
  %v710 = vunpack.c.h.b16 %v30
  %v711 = vunpack.c.l.b16 %v31
  %v712 = vunpack.c.h.b16 %v31
  %v713 = vunpack.c.l.b16 %v32
  %v714 = vunpack.c.h.b16 %v32
  %v715 = vunpack.c.l.b16 %v33
  %v716 = vunpack.c.h.b16 %v33
  %v717 = vunpack.c.l.b16 %v34
  %v718 = vunpack.c.h.b16 %v34
  %v719 = vunpack.c.l.b16 %v35
  %v720 = vunpack.c.h.b16 %v35
  %v721 = vunpack.c.l.b16 %v36
  %v722 = vunpack.c.h.b16 %v36
  %v723 = vunpack.c.l.b16 %v37
  %v724 = vunpack.c.h.b16 %v37
  %v725 = vunpack.c.l.b16 %v38
  %v726 = vunpack.c.h.b16 %v38
  %v727 = vunpack.c.l.b16 %v39
  %v728 = vunpack.c.h.b16 %v39
  %v729 = vunpack.c.l.b16 %v40
  %v730 = vunpack.c.h.b16 %v40
  %v731 = vunpack.c.l.b16 %v41
  %v732 = vunpack.c.h.b16 %v41
  %v733 = vunpack.c.l.b16 %v42
  %v734 = vunpack.c.h.b16 %v42
  %v735 = vunpack.c.l.b16 %v43
  %v736 = vunpack.c.h.b16 %v43
  %v737 = vunpack.c.l.b16 %v44
  %v738 = vunpack.c.h.b16 %v44
  %v739 = vunpack.c.l.b16 %v45
  %v740 = vunpack.c.h.b16 %v45
  %v741 = vunpack.c.l.b16 %v46
  %v742 = vunpack.c.h.b16 %v46
  %v743 = vunpack.c.l.b16 %v47
  %v744 = vunpack.c.h.b16 %v47
  %v745 = vunpack.c.l.b16 %v48
  %v746 = vunpack.c.h.b16 %v48
  %v747 = vunpack.c.l.b16 %v49
  %v748 = vunpack.c.h.b16 %v49
  %v749 = vunpack.c.l.b16 %v50
  %v750 = vunpack.c.h.b16 %v50
  %v751 = vunpack.c.l.b16 %v51
  %v752 = vunpack.c.h.b16 %v51
  %v753 = vunpack.c.l.b16 %v52
  %v754 = vunpack.c.h.b16 %v52
  %v755 = vunpack.c.l.b16 %v53
  %v756 = vunpack.c.h.b16 %v53
  %v757 = vunpack.c.l.b16 %v54
  %v758 = vunpack.c.h.b16 %v54
  %v759 = vunpack.c.l.b16 %v55
  %v760 = vunpack.c.h.b16 %v55
  %v761 = vunpack.c.l.b16 %v56
  %v762 = vunpack.c.h.b16 %v56
  %v763 = vunpack.c.l.b16 %v57
  %v764 = vunpack.c.h.b16 %v57
  %v765 = vunpack.c.l.b16 %v58
  %v766 = vunpack.c.h.b16 %v58
  %v767 = vunpack.c.l.b16 %v59
  %v768 = vunpack.c.h.b16 %v59
  %v769 = vunpack.c.l.b16 %v60
  %v770 = vunpack.c.h.b16 %v60
  %v771 = vunpack.c.l.b16 %v61
  %v772 = vunpack.c.h.b16 %v61
  %v773 = vunpack.c.l.b16 %v62
  %v774 = vunpack.c.h.b16 %v62
  %v775 = vunpack.c.l.b16 %v63
  %v776 = vunpack.c.h.b16 %v63
  %v777 = vunpack.c.l.b16 %v64
  %v778 = vunpack.c.h.b16 %v64
  %v779 = vunpack.c.l.b16 %v65
  %v780 = vunpack.c.h.b16 %v65
  %v781 = vunpack.c.l.b16 %v66
  %v782 = vunpack.c.h.b16 %v66
  %v783 = vunpack.c.l.b16 %v67
  %v784 = vunpack.c.h.b16 %v67
  %v785 = vunpack.c.l.b16 %v68
  %v786 = vunpack.c.h.b16 %v68
  %v787 = vunpack.c.l.b16 %v69
  %v788 = vunpack.c.h.b16 %v69
  %v789 = vunpack.c.l.b16 %v70
  %v790 = vunpack.c.h.b16 %v70
  %v791 = vunpack.c.l.b16 %v71
  %v792 = vunpack.c.h.b16 %v71
  %v793 = vunpack.c.l.b16 %v72
  %v794 = vunpack.c.h.b16 %v72
  %v795 = vunpack.c.l.b16 %v73
  %v796 = vunpack.c.h.b16 %v73
  %v797 = vunpack.c.l.b16 %v74
  %v798 = vunpack.c.h.b16 %v74
  %v799 = vunpack.c.l.b16 %v75
  %v800 = vunpack.c.h.b16 %v75
  %v801 = vunpack.c.l.b16 %v76
  %v802 = vunpack.c.h.b16 %v76
  %v803 = vunpack.c.l.b16 %v77
  %v804 = vunpack.c.h.b16 %v77
  %v805 = vunpack.c.l.b16 %v78
  %v806 = vunpack.c.h.b16 %v78
  %v807 = vunpack.c.l.b16 %v79
  %v808 = vunpack.c.h.b16 %v79
  %v809 = vunpack.c.l.b16 %v80
  %v810 = vunpack.c.h.b16 %v80
  %v811 = vunpack.c.l.b16 %v81
  %v812 = vunpack.c.h.b16 %v81
  %v813 = vunpack.c.l.b16 %v82
  %v814 = vunpack.c.h.b16 %v82
  %v815 = vunpack.c.l.b16 %v83
  %v816 = vunpack.c.h.b16 %v83
  %v817 = vunpack.c.l.b16 %v84
  %v818 = vunpack.c.h.b16 %v84
  %v819 = vunpack.c.l.b16 %v85
  %v820 = vunpack.c.h.b16 %v85
  %v821 = vunpack.c.l.b16 %v86
  %v822 = vunpack.c.h.b16 %v86
  %v823 = vunpack.c.l.b16 %v87
  %v824 = vunpack.c.h.b16 %v87
  %v825 = vunpack.c.l.b16 %v88
  %v826 = vunpack.c.h.b16 %v88
  %v827 = vunpack.c.l.b16 %v89
  %v828 = vunpack.c.h.b16 %v89
  %v829 = vunpack.c.l.b16 %v90
  %v830 = vunpack.c.h.b16 %v90
  %v831 = vunpack.c.l.b16 %v91
  %v832 = vunpack.c.h.b16 %v91
  %v833 = vunpack.c.l.b16 %v92
  %v834 = vunpack.c.h.b16 %v92
  %v835 = vunpack.c.l.b16 %v93
  %v836 = vunpack.c.h.b16 %v93
  %v837 = vunpack.c.l.b16 %v94
  %v838 = vunpack.c.h.b16 %v94
  %v839 = vunpack.c.l.b16 %v95
  %v840 = vunpack.c.h.b16 %v95
  %v841 = vunpack.c.l.b16 %v96
  %v842 = vunpack.c.h.b16 %v96
  %v843 = vunpack.c.l.b16 %v97
  %v844 = vunpack.c.h.b16 %v97
  %v845 = vunpack.c.l.b16 %v98
  %v846 = vunpack.c.h.b16 %v98
  %v847 = vunpack.c.l.b16 %v99
  %v848 = vunpack.c.h.b16 %v99
  %v849 = vunpack.c.l.b16 %v100
  %v850 = vunpack.c.h.b16 %v100
  %v851 = vunpack.c.l.b16 %v101
  %v852 = vunpack.c.h.b16 %v101
  %v853 = vunpack.c.l.b16 %v102
  %v854 = vunpack.c.h.b16 %v102
  %v855 = vunpack.c.l.b16 %v103
  %v856 = vunpack.c.h.b16 %v103
  %v857 = vunpack.c.l.b16 %v104
  %v858 = vunpack.c.h.b16 %v104
  %v859 = vunpack.c.l.b16 %v105
  %v860 = vunpack.c.h.b16 %v105
  %v861 = vunpack.c.l.b16 %v106
  %v862 = vunpack.c.h.b16 %v106
  %v863 = vunpack.c.l.b16 %v107
  %v864 = vunpack.c.h.b16 %v107
  %v865 = vunpack.c.l.b16 %v108
  %v866 = vunpack.c.h.b16 %v108
  %v867 = vunpack.c.l.b16 %v109
  %v868 = vunpack.c.h.b16 %v109
  %v869 = vunpack.c.l.b16 %v110
  %v870 = vunpack.c.h.b16 %v110
  %v871 = vunpack.c.l.b16 %v111
  %v872 = vunpack.c.h.b16 %v111
  %v873 = vunpack.c.l.b16 %v112
  %v874 = vunpack.c.h.b16 %v112
  %v875 = vunpack.c.l.b16 %v113
  %v876 = vunpack.c.h.b16 %v113
  %v877 = vunpack.c.l.b16 %v114
  %v878 = vunpack.c.h.b16 %v114
  %v879 = vunpack.c.l.b16 %v115
  %v880 = vunpack.c.h.b16 %v115
  %v881 = vunpack.c.l.b16 %v116
  %v882 = vunpack.c.h.b16 %v116
  %v883 = vunpack.c.l.b16 %v117
  %v884 = vunpack.c.h.b16 %v117
  %v885 = vunpack.c.l.b16 %v118
  %v886 = vunpack.c.h.b16 %v118
  %v887 = vunpack.c.l.b16 %v119
  %v888 = vunpack.c.h.b16 %v119
  %v889 = vunpack.c.l.b16 %v120
  %v890 = vunpack.c.h.b16 %v120
  %v891 = vunpack.c.l.b16 %v121
  %v892 = vunpack.c.h.b16 %v121
  %v893 = vunpack.c.l.b16 %v122
  %v894 = vunpack.c.h.b16 %v122
  %v895 = vunpack.c.l.b16 %v123
  %v896 = vunpack.c.h.b16 %v123
  %v897 = vunpack.c.l.b16 %v124
  %v898 = vunpack.c.h.b16 %v124
  %v899 = vunpack.c.l.b16 %v125
  %v900 = vunpack.c.h.b16 %v125
  %v901 = vunpack.c.l.b16 %v126
  %v902 = vunpack.c.h.b16 %v126
  %v903 = vunpack.c.l.b16 %v127
  %v904 = vunpack.c.h.b16 %v127
  %v905 = vunpack.c.l.b16 %v128
  %v906 = vunpack.c.h.b16 %v128
  %v907 = vunpack.c.l.b16 %v129
  %v908 = vunpack.c.h.b16 %v129
  %v909 = vunpack.c.l.b16 %v130
  %v910 = vunpack.c.h.b16 %v130
  %v911 = vunpack.c.l.b16 %v131
  %v912 = vunpack.c.h.b16 %v131
  %v913 = vunpack.c.l.b16 %v132
  %v914 = vunpack.c.h.b16 %v132
  %v915 = vunpack.c.l.b16 %v133
  %v916 = vunpack.c.h.b16 %v133
  %v917 = vunpack.c.l.b16 %v134
  %v918 = vunpack.c.h.b16 %v134
  %v919 = vunpack.c.l.b16 %v135
  %v920 = vunpack.c.h.b16 %v135
  %v921 = vunpack.c.l.b16 %v136
  %v922 = vunpack.c.h.b16 %v136
  %v923 = vunpack.c.l.b16 %v137
  %v924 = vunpack.c.h.b16 %v137
  %v925 = vunpack.c.l.b16 %v138
  %v926 = vunpack.c.h.b16 %v138
  %v927 = vunpack.c.l.b16 %v139
  %v928 = vunpack.c.h.b16 %v139
  %v929 = vunpack.c.l.b16 %v140
  %v930 = vunpack.c.h.b16 %v140
  %v931 = vunpack.c.l.b16 %v141
  %v932 = vunpack.c.h.b16 %v141
  %v933 = vunpack.c.l.b16 %v142
  %v934 = vunpack.c.h.b16 %v142
  %v935 = vunpack.c.l.b16 %v143
  %v936 = vunpack.c.h.b16 %v143
  %v937 = vunpack.c.l.b16 %v144
  %v938 = vunpack.c.h.b16 %v144
  %v939 = vunpack.c.l.b16 %v145
  %v940 = vunpack.c.h.b16 %v145
  %v941 = vunpack.c.l.b16 %v146
  %v942 = vunpack.c.h.b16 %v146
  %v943 = vunpack.c.l.b16 %v147
  %v944 = vunpack.c.h.b16 %v147
  %v945 = vunpack.c.l.b16 %v148
  %v946 = vunpack.c.h.b16 %v148
  %v947 = vunpack.c.l.b16 %v149
  %v948 = vunpack.c.h.b16 %v149
  %v949 = vunpack.c.l.b16 %v150
  %v950 = vunpack.c.h.b16 %v150
  %v951 = vunpack.c.l.b16 %v151
  %v952 = vunpack.c.h.b16 %v151
  %v953 = vunpack.c.l.b16 %v152
  %v954 = vunpack.c.h.b16 %v152
  %v955 = vunpack.c.l.b16 %v153
  %v956 = vunpack.c.h.b16 %v153
  %v957 = vunpack.c.l.b16 %v154
  %v958 = vunpack.c.h.b16 %v154
  %v959 = vunpack.c.l.b16 %v155
  %v960 = vunpack.c.h.b16 %v155
  %v961 = vunpack.c.l.b16 %v156
  %v962 = vunpack.c.h.b16 %v156
  %v963 = vunpack.c.l.b16 %v157
  %v964 = vunpack.c.h.b16 %v157
  %v965 = vunpack.c.l.b16 %v158
  %v966 = vunpack.c.h.b16 %v158
  %v967 = vunpack.c.l.b16 %v159
  %v968 = vunpack.c.h.b16 %v159
  %v969 = vunpack.c.l.b16 %v160
  %v970 = vunpack.c.h.b16 %v160
  %v971 = vunpack.c.l.b16 %v161
  %v972 = vunpack.c.h.b16 %v161
  %v973 = vunpack.c.l.b16 %v162
  %v974 = vunpack.c.h.b16 %v162
  %v975 = vunpack.c.l.b16 %v163
  %v976 = vunpack.c.h.b16 %v163
  %v977 = vunpack.c.l.b16 %v164
  %v978 = vunpack.c.h.b16 %v164
  %v979 = vunpack.c.l.b16 %v165
  %v980 = vunpack.c.h.b16 %v165
  %v981 = vunpack.c.l.b16 %v166
  %v982 = vunpack.c.h.b16 %v166
  %v983 = vunpack.c.l.b16 %v167
  %v984 = vunpack.c.h.b16 %v167
  %v985 = vunpack.c.l.b16 %v168
  %v986 = vunpack.c.h.b16 %v168
  %v987 = vunpack.c.l.b16 %v169
  %v988 = vunpack.c.h.b16 %v169
  %v989 = vunpack.c.l.b16 %v170
  %v990 = vunpack.c.h.b16 %v170
  %v991 = vunpack.c.l.b16 %v171
  %v992 = vunpack.c.h.b16 %v171
  %v993 = vunpack.c.l.b16 %v172
  %v994 = vunpack.c.h.b16 %v172
  %v995 = vunpack.c.l.b16 %v173
  %v996 = vunpack.c.h.b16 %v173
  %v997 = vunpack.c.l.b16 %v174
  %v998 = vunpack.c.h.b16 %v174
  %v999 = vunpack.c.l.b16 %v175
  %v1000 = vunpack.c.h.b16 %v175
  %v1001 = vunpack.c.l.b16 %v176
  %v1002 = vunpack.c.h.b16 %v176
  %v1003 = vunpack.c.l.b16 %v177
  %v1004 = vunpack.c.h.b16 %v177
  %v1005 = vunpack.c.l.b16 %v178
  %v1006 = vunpack.c.h.b16 %v178
  %v1007 = vunpack.c.l.b16 %v179
  %v1008 = vunpack.c.h.b16 %v179
  %v1009 = vunpack.c.l.b16 %v180
  %v1010 = vunpack.c.h.b16 %v180
  %v1011 = vunpack.c.l.b16 %v181
  %v1012 = vunpack.c.h.b16 %v181
  %v1013 = vunpack.c.l.b16 %v182
  %v1014 = vunpack.c.h.b16 %v182
  %v1015 = vunpack.c.l.b16 %v183
  %v1016 = vunpack.c.h.b16 %v183
  %v1017 = vunpack.c.l.b16 %v184
  %v1018 = vunpack.c.h.b16 %v184
  %v1019 = vunpack.c.l.b16 %v185
  %v1020 = vunpack.c.h.b16 %v185
  %v1021 = vunpack.c.l.b16 %v186
  %v1022 = vunpack.c.h.b16 %v186
  %v1023 = vunpack.c.l.b16 %v187
  %v1024 = vunpack.c.h.b16 %v187
  %v1025 = vunpack.c.l.b16 %v188
  %v1026 = vunpack.c.h.b16 %v188
  %v1027 = vunpack.c.l.b16 %v189
  %v1028 = vunpack.c.h.b16 %v189
  %v1029 = vunpack.c.l.b16 %v190
  %v1030 = vunpack.c.h.b16 %v190
  %v1031 = vunpack.c.l.b16 %v191
  %v1032 = vunpack.c.h.b16 %v191
  %v1033 = vunpack.c.l.b16 %v192
  %v1034 = vunpack.c.h.b16 %v192
  %v1035 = vunpack.c.l.b16 %v193
  %v1036 = vunpack.c.h.b16 %v193
  %v1037 = vunpack.c.l.b16 %v194
  %v1038 = vunpack.c.h.b16 %v194
  %v1039 = vunpack.c.l.b16 %v195
  %v1040 = vunpack.c.h.b16 %v195
  %v1041 = vunpack.c.l.b16 %v196
  %v1042 = vunpack.c.h.b16 %v196
  %v1043 = vunpack.c.l.b16 %v197
  %v1044 = vunpack.c.h.b16 %v197
  %v1045 = vunpack.c.l.b16 %v198
  %v1046 = vunpack.c.h.b16 %v198
  %v1047 = vunpack.c.l.b16 %v199
  %v1048 = vunpack.c.h.b16 %v199
  %v1049 = vunpack.c.l.b16 %v200
  %v1050 = vunpack.c.h.b16 %v200
  %v1051 = vunpack.c.l.b16 %v201
  %v1052 = vunpack.c.h.b16 %v201
  %v1053 = vunpack.c.l.b16 %v202
  %v1054 = vunpack.c.h.b16 %v202
  %v1055 = vunpack.c.l.b16 %v203
  %v1056 = vunpack.c.h.b16 %v203
  %v1057 = vunpack.c.l.b16 %v204
  %v1058 = vunpack.c.h.b16 %v204
  %v1059 = vunpack.c.l.b16 %v205
  %v1060 = vunpack.c.h.b16 %v205
  %v1061 = vpack.c.b16 %v701, %v683
  %v1062 = vpack.c.b16 %v702, %v684
  %v1063 = vpack.c.b16 %v703, %v685
  %v1064 = vpack.c.b16 %v704, %v686
  %v1065 = vpack.c.b16 %v705, %v687
  %v1066 = vpack.c.b16 %v706, %v688
  %v1067 = vpack.c.b16 %v707, %v689
  %v1068 = vpack.c.b16 %v708, %v690
  %v1069 = vpack.c.b16 %v709, %v691
  %v1070 = vpack.c.b16 %v710, %v692
  %v1071 = vpack.c.b16 %v711, %v693
  %v1072 = vpack.c.b16 %v712, %v694
  %v1073 = vpack.c.b16 %v713, %v695
  %v1074 = vpack.c.b16 %v714, %v696
  %v1075 = vpack.c.b16 %v715, %v697
  %v1076 = vpack.c.b16 %v716, %v698
  %v1077 = vpack.c.b16 %v717, %v699
  %v1078 = vpack.c.b16 %v718, %v700
  %v1079 = vpack.c.b16 %v737, %v719
  %v1080 = vpack.c.b16 %v738, %v720
  %v1081 = vpack.c.b16 %v739, %v721
  %v1082 = vpack.c.b16 %v740, %v722
  %v1083 = vpack.c.b16 %v741, %v723
  %v1084 = vpack.c.b16 %v742, %v724
  %v1085 = vpack.c.b16 %v743, %v725
  %v1086 = vpack.c.b16 %v744, %v726
  %v1087 = vpack.c.b16 %v745, %v727
  %v1088 = vpack.c.b16 %v746, %v728
  %v1089 = vpack.c.b16 %v747, %v729
  %v1090 = vpack.c.b16 %v748, %v730
  %v1091 = vpack.c.b16 %v749, %v731
  %v1092 = vpack.c.b16 %v750, %v732
  %v1093 = vpack.c.b16 %v751, %v733
  %v1094 = vpack.c.b16 %v752, %v734
  %v1095 = vpack.c.b16 %v753, %v735
  %v1096 = vpack.c.b16 %v754, %v736
  %v1097 = vpack.c.b16 %v773, %v755
  %v1098 = vpack.c.b16 %v774, %v756
  %v1099 = vpack.c.b16 %v775, %v757
  %v1100 = vpack.c.b16 %v776, %v758
  %v1101 = vpack.c.b16 %v777, %v759
  %v1102 = vpack.c.b16 %v778, %v760
  %v1103 = vpack.c.b16 %v779, %v761
  %v1104 = vpack.c.b16 %v780, %v762
  %v1105 = vpack.c.b16 %v781, %v763
  %v1106 = vpack.c.b16 %v782, %v764
  %v1107 = vpack.c.b16 %v783, %v765
  %v1108 = vpack.c.b16 %v784, %v766
  %v1109 = vpack.c.b16 %v785, %v767
  %v1110 = vpack.c.b16 %v786, %v768
  %v1111 = vpack.c.b16 %v787, %v769
  %v1112 = vpack.c.b16 %v788, %v770
  %v1113 = vpack.c.b16 %v789, %v771
  %v1114 = vpack.c.b16 %v790, %v772
  %v1115 = vpack.c.b16 %v809, %v791
  %v1116 = vpack.c.b16 %v810, %v792
  %v1117 = vpack.c.b16 %v811, %v793
  %v1118 = vpack.c.b16 %v812, %v794
  %v1119 = vpack.c.b16 %v813, %v795
  %v1120 = vpack.c.b16 %v814, %v796
  %v1121 = vpack.c.b16 %v815, %v797
  %v1122 = vpack.c.b16 %v816, %v798
  %v1123 = vpack.c.b16 %v817, %v799
  %v1124 = vpack.c.b16 %v818, %v800
  %v1125 = vpack.c.b16 %v819, %v801
  %v1126 = vpack.c.b16 %v820, %v802
  %v1127 = vpack.c.b16 %v821, %v803
  %v1128 = vpack.c.b16 %v822, %v804
  %v1129 = vpack.c.b16 %v823, %v805
  %v1130 = vpack.c.b16 %v824, %v806
  %v1131 = vpack.c.b16 %v825, %v807
  %v1132 = vpack.c.b16 %v826, %v808
  %v1133 = vpack.c.b16 %v845, %v827
  %v1134 = vpack.c.b16 %v846, %v828
  %v1135 = vpack.c.b16 %v847, %v829
  %v1136 = vpack.c.b16 %v848, %v830
  %v1137 = vpack.c.b16 %v849, %v831
  %v1138 = vpack.c.b16 %v850, %v832
  %v1139 = vpack.c.b16 %v851, %v833
  %v1140 = vpack.c.b16 %v852, %v834
  %v1141 = vpack.c.b16 %v853, %v835
  %v1142 = vpack.c.b16 %v854, %v836
  %v1143 = vpack.c.b16 %v855, %v837
  %v1144 = vpack.c.b16 %v856, %v838
  %v1145 = vpack.c.b16 %v857, %v839
  %v1146 = vpack.c.b16 %v858, %v840
  %v1147 = vpack.c.b16 %v859, %v841
  %v1148 = vpack.c.b16 %v860, %v842
  %v1149 = vpack.c.b16 %v861, %v843
  %v1150 = vpack.c.b16 %v862, %v844
  %v1151 = vpack.c.b16 %v881, %v863
  %v1152 = vpack.c.b16 %v882, %v864
  %v1153 = vpack.c.b16 %v883, %v865
  %v1154 = vpack.c.b16 %v884, %v866
  %v1155 = vpack.c.b16 %v885, %v867
  %v1156 = vpack.c.b16 %v886, %v868
  %v1157 = vpack.c.b16 %v887, %v869
  %v1158 = vpack.c.b16 %v888, %v870
  %v1159 = vpack.c.b16 %v889, %v871
  %v1160 = vpack.c.b16 %v890, %v872
  %v1161 = vpack.c.b16 %v891, %v873
  %v1162 = vpack.c.b16 %v892, %v874
  %v1163 = vpack.c.b16 %v893, %v875
  %v1164 = vpack.c.b16 %v894, %v876
  %v1165 = vpack.c.b16 %v895, %v877
  %v1166 = vpack.c.b16 %v896, %v878
  %v1167 = vpack.c.b16 %v897, %v879
  %v1168 = vpack.c.b16 %v898, %v880
  %v1169 = vpack.c.b16 %v917, %v899
  %v1170 = vpack.c.b16 %v918, %v900
  %v1171 = vpack.c.b16 %v919, %v901
  %v1172 = vpack.c.b16 %v920, %v902
  %v1173 = vpack.c.b16 %v921, %v903
  %v1174 = vpack.c.b16 %v922, %v904
  %v1175 = vpack.c.b16 %v923, %v905
  %v1176 = vpack.c.b16 %v924, %v906
  %v1177 = vpack.c.b16 %v925, %v907
  %v1178 = vpack.c.b16 %v926, %v908
  %v1179 = vpack.c.b16 %v927, %v909
  %v1180 = vpack.c.b16 %v928, %v910
  %v1181 = vpack.c.b16 %v929, %v911
  %v1182 = vpack.c.b16 %v930, %v912
  %v1183 = vpack.c.b16 %v931, %v913
  %v1184 = vpack.c.b16 %v932, %v914
  %v1185 = vpack.c.b16 %v933, %v915
  %v1186 = vpack.c.b16 %v934, %v916
  %v1187 = vpack.c.b16 %v953, %v935
  %v1188 = vpack.c.b16 %v954, %v936
  %v1189 = vpack.c.b16 %v955, %v937
  %v1190 = vpack.c.b16 %v956, %v938
  %v1191 = vpack.c.b16 %v957, %v939
  %v1192 = vpack.c.b16 %v958, %v940
  %v1193 = vpack.c.b16 %v959, %v941
  %v1194 = vpack.c.b16 %v960, %v942
  %v1195 = vpack.c.b16 %v961, %v943
  %v1196 = vpack.c.b16 %v962, %v944
  %v1197 = vpack.c.b16 %v963, %v945
  %v1198 = vpack.c.b16 %v964, %v946
  %v1199 = vpack.c.b16 %v965, %v947
  %v1200 = vpack.c.b16 %v966, %v948
  %v1201 = vpack.c.b16 %v967, %v949
  %v1202 = vpack.c.b16 %v968, %v950
  %v1203 = vpack.c.b16 %v969, %v951
  %v1204 = vpack.c.b16 %v970, %v952
  %v1205 = vpack.c.b16 %v989, %v971
  %v1206 = vpack.c.b16 %v990, %v972
  %v1207 = vpack.c.b16 %v991, %v973
  %v1208 = vpack.c.b16 %v992, %v974
  %v1209 = vpack.c.b16 %v993, %v975
  %v1210 = vpack.c.b16 %v994, %v976
  %v1211 = vpack.c.b16 %v995, %v977
  %v1212 = vpack.c.b16 %v996, %v978
  %v1213 = vpack.c.b16 %v997, %v979
  %v1214 = vpack.c.b16 %v998, %v980
  %v1215 = vpack.c.b16 %v999, %v981
  %v1216 = vpack.c.b16 %v1000, %v982
  %v1217 = vpack.c.b16 %v1001, %v983
  %v1218 = vpack.c.b16 %v1002, %v984
  %v1219 = vpack.c.b16 %v1003, %v985
  %v1220 = vpack.c.b16 %v1004, %v986
  %v1221 = vpack.c.b16 %v1005, %v987
  %v1222 = vpack.c.b16 %v1006, %v988
  %v1223 = vpack.c.b16 %v1025, %v1007
  %v1224 = vpack.c.b16 %v1026, %v1008
  %v1225 = vpack.c.b16 %v1027, %v1009
  %v1226 = vpack.c.b16 %v1028, %v1010
  %v1227 = vpack.c.b16 %v1029, %v1011
  %v1228 = vpack.c.b16 %v1030, %v1012
  %v1229 = vpack.c.b16 %v1031, %v1013
  %v1230 = vpack.c.b16 %v1032, %v1014
  %v1231 = vpack.c.b16 %v1033, %v1015
  %v1232 = vpack.c.b16 %v1034, %v1016
  %v1233 = vpack.c.b16 %v1035, %v1017
  %v1234 = vpack.c.b16 %v1036, %v1018
  %v1235 = vpack.c.b16 %v1037, %v1019
  %v1236 = vpack.c.b16 %v1038, %v1020
  %v1237 = vpack.c.b16 %v1039, %v1021
  %v1238 = vpack.c.b16 %v1040, %v1022
  %v1239 = vpack.c.b16 %v1041, %v1023
  %v1240 = vpack.c.b16 %v1042, %v1024
  %v1241 = vpack.c.b16 %v1043, %v1043
  %v1242 = vpack.c.b16 %v1044, %v1044
  %v1243 = vpack.c.b16 %v1045, %v1045
  %v1244 = vpack.c.b16 %v1046, %v1046
  %v1245 = vpack.c.b16 %v1047, %v1047
  %v1246 = vpack.c.b16 %v1048, %v1048
  %v1247 = vpack.c.b16 %v1049, %v1049
  %v1248 = vpack.c.b16 %v1050, %v1050
  %v1249 = vpack.c.b16 %v1051, %v1051
  %v1250 = vpack.c.b16 %v1052, %v1052
  %v1251 = vpack.c.b16 %v1053, %v1053
  %v1252 = vpack.c.b16 %v1054, %v1054
  %v1253 = vpack.c.b16 %v1055, %v1055
  %v1254 = vpack.c.b16 %v1056, %v1056
  %v1255 = vpack.c.b16 %v1057, %v1057
  %v1256 = vpack.c.b16 %v1058, %v1058
  %v1257 = vpack.c.b16 %v1059, %v1059
  %v1258 = vpack.c.b16 %v1060, %v1060
  %v1745 = vunpack.c.l.b16 %v206
  %v1746 = vunpack.c.h.b16 %v206
  %v1747 = vunpack.c.l.b16 %v207
  %v1748 = vunpack.c.h.b16 %v207
  %v1749 = vunpack.c.l.b16 %v208
  %v1750 = vunpack.c.h.b16 %v208
  %v1751 = vunpack.c.l.b16 %v209
  %v1752 = vunpack.c.h.b16 %v209
  %v1753 = vunpack.c.l.b16 %v210
  %v1754 = vunpack.c.h.b16 %v210
  %v1755 = vunpack.c.l.b16 %v211
  %v1756 = vunpack.c.h.b16 %v211
  %v1757 = vunpack.c.l.b16 %v212
  %v1758 = vunpack.c.h.b16 %v212
  %v1759 = vunpack.c.l.b16 %v213
  %v1760 = vunpack.c.h.b16 %v213
  %v1761 = vunpack.c.l.b16 %v214
  %v1762 = vunpack.c.h.b16 %v214
  %v1763 = vunpack.c.l.b16 %v215
  %v1764 = vunpack.c.h.b16 %v215
  %v1765 = vunpack.c.l.b16 %v216
  %v1766 = vunpack.c.h.b16 %v216
  %v1767 = vunpack.c.l.b16 %v217
  %v1768 = vunpack.c.h.b16 %v217
  %v1769 = vunpack.c.l.b16 %v218
  %v1770 = vunpack.c.h.b16 %v218
  %v1771 = vunpack.c.l.b16 %v219
  %v1772 = vunpack.c.h.b16 %v219
  %v1773 = vunpack.c.l.b16 %v220
  %v1774 = vunpack.c.h.b16 %v220
  %v1775 = vunpack.c.l.b16 %v221
  %v1776 = vunpack.c.h.b16 %v221
  %v1777 = vunpack.c.l.b16 %v222
  %v1778 = vunpack.c.h.b16 %v222
  %v1779 = vunpack.c.l.b16 %v223
  %v1780 = vunpack.c.h.b16 %v223
  %v1781 = vunpack.c.l.b16 %v224
  %v1782 = vunpack.c.h.b16 %v224
  %v1783 = vunpack.c.l.b16 %v225
  %v1784 = vunpack.c.h.b16 %v225
  %v1785 = vunpack.c.l.b16 %v226
  %v1786 = vunpack.c.h.b16 %v226
  %v1787 = vunpack.c.l.b16 %v227
  %v1788 = vunpack.c.h.b16 %v227
  %v1789 = vunpack.c.l.b16 %v228
  %v1790 = vunpack.c.h.b16 %v228
  %v1791 = vunpack.c.l.b16 %v229
  %v1792 = vunpack.c.h.b16 %v229
  %v1793 = vunpack.c.l.b16 %v230
  %v1794 = vunpack.c.h.b16 %v230
  %v1795 = vunpack.c.l.b16 %v231
  %v1796 = vunpack.c.h.b16 %v231
  %v1797 = vunpack.c.l.b16 %v232
  %v1798 = vunpack.c.h.b16 %v232
  %v1799 = vunpack.c.l.b16 %v233
  %v1800 = vunpack.c.h.b16 %v233
  %v1801 = vunpack.c.l.b16 %v234
  %v1802 = vunpack.c.h.b16 %v234
  %v1803 = vunpack.c.l.b16 %v235
  %v1804 = vunpack.c.h.b16 %v235
  %v1805 = vunpack.c.l.b16 %v236
  %v1806 = vunpack.c.h.b16 %v236
  %v1807 = vunpack.c.l.b16 %v237
  %v1808 = vunpack.c.h.b16 %v237
  %v1809 = vunpack.c.l.b16 %v238
  %v1810 = vunpack.c.h.b16 %v238
  %v1811 = vunpack.c.l.b16 %v239
  %v1812 = vunpack.c.h.b16 %v239
  %v1813 = vunpack.c.l.b16 %v240
  %v1814 = vunpack.c.h.b16 %v240
  %v1815 = vunpack.c.l.b16 %v241
  %v1816 = vunpack.c.h.b16 %v241
  %v1817 = vunpack.c.l.b16 %v242
  %v1818 = vunpack.c.h.b16 %v242
  %v1819 = vunpack.c.l.b16 %v243
  %v1820 = vunpack.c.h.b16 %v243
  %v1821 = vunpack.c.l.b16 %v244
  %v1822 = vunpack.c.h.b16 %v244
  %v1823 = vunpack.c.l.b16 %v245
  %v1824 = vunpack.c.h.b16 %v245
  %v1825 = vunpack.c.l.b16 %v246
  %v1826 = vunpack.c.h.b16 %v246
  %v1827 = vunpack.c.l.b16 %v247
  %v1828 = vunpack.c.h.b16 %v247
  %v1829 = vunpack.c.l.b16 %v248
  %v1830 = vunpack.c.h.b16 %v248
  %v1831 = vunpack.c.l.b16 %v249
  %v1832 = vunpack.c.h.b16 %v249
  %v1833 = vunpack.c.l.b16 %v250
  %v1834 = vunpack.c.h.b16 %v250
  %v1835 = vunpack.c.l.b16 %v251
  %v1836 = vunpack.c.h.b16 %v251
  %v1837 = vunpack.c.l.b16 %v252
  %v1838 = vunpack.c.h.b16 %v252
  %v1839 = vunpack.c.l.b16 %v253
  %v1840 = vunpack.c.h.b16 %v253
  %v1841 = vunpack.c.l.b16 %v254
  %v1842 = vunpack.c.h.b16 %v254
  %v1843 = vunpack.c.l.b16 %v255
  %v1844 = vunpack.c.h.b16 %v255
  %v1845 = vunpack.c.l.b16 %v256
  %v1846 = vunpack.c.h.b16 %v256
  %v1847 = vunpack.c.l.b16 %v257
  %v1848 = vunpack.c.h.b16 %v257
  %v1849 = vunpack.c.l.b16 %v258
  %v1850 = vunpack.c.h.b16 %v258
  %v1851 = vunpack.c.l.b16 %v259
  %v1852 = vunpack.c.h.b16 %v259
  %v1853 = vunpack.c.l.b16 %v260
  %v1854 = vunpack.c.h.b16 %v260
  %v1855 = vunpack.c.l.b16 %v261
  %v1856 = vunpack.c.h.b16 %v261
  %v1857 = vunpack.c.l.b16 %v262
  %v1858 = vunpack.c.h.b16 %v262
  %v1859 = vunpack.c.l.b16 %v263
  %v1860 = vunpack.c.h.b16 %v263
  %v1861 = vunpack.c.l.b16 %v264
  %v1862 = vunpack.c.h.b16 %v264
  %v1863 = vunpack.c.l.b16 %v265
  %v1864 = vunpack.c.h.b16 %v265
  %v1865 = vunpack.c.l.b16 %v266
  %v1866 = vunpack.c.h.b16 %v266
  %v1867 = vunpack.c.l.b16 %v267
  %v1868 = vunpack.c.h.b16 %v267
  %v1869 = vunpack.c.l.b16 %v268
  %v1870 = vunpack.c.h.b16 %v268
  %v1871 = vunpack.c.l.b16 %v269
  %v1872 = vunpack.c.h.b16 %v269
  %v1873 = vunpack.c.l.b16 %v270
  %v1874 = vunpack.c.h.b16 %v270
  %v1875 = vunpack.c.l.b16 %v271
  %v1876 = vunpack.c.h.b16 %v271
  %v1877 = vunpack.c.l.b16 %v272
  %v1878 = vunpack.c.h.b16 %v272
  %v1879 = vunpack.c.l.b16 %v273
  %v1880 = vunpack.c.h.b16 %v273
  %v1881 = vunpack.c.l.b16 %v274
  %v1882 = vunpack.c.h.b16 %v274
  %v1883 = vunpack.c.l.b16 %v275
  %v1884 = vunpack.c.h.b16 %v275
  %v1885 = vunpack.c.l.b16 %v276
  %v1886 = vunpack.c.h.b16 %v276
  %v1887 = vunpack.c.l.b16 %v277
  %v1888 = vunpack.c.h.b16 %v277
  %v1889 = vunpack.c.l.b16 %v278
  %v1890 = vunpack.c.h.b16 %v278
  %v1891 = vunpack.c.l.b16 %v279
  %v1892 = vunpack.c.h.b16 %v279
  %v1893 = vunpack.c.l.b16 %v280
  %v1894 = vunpack.c.h.b16 %v280
  %v1895 = vunpack.c.l.b16 %v281
  %v1896 = vunpack.c.h.b16 %v281
  %v1897 = vunpack.c.l.b16 %v282
  %v1898 = vunpack.c.h.b16 %v282
  %v1899 = vunpack.c.l.b16 %v283
  %v1900 = vunpack.c.h.b16 %v283
  %v1901 = vunpack.c.l.b16 %v284
  %v1902 = vunpack.c.h.b16 %v284
  %v1903 = vunpack.c.l.b16 %v285
  %v1904 = vunpack.c.h.b16 %v285
  %v1905 = vunpack.c.l.b16 %v286
  %v1906 = vunpack.c.h.b16 %v286
  %v1907 = vunpack.c.l.b16 %v287
  %v1908 = vunpack.c.h.b16 %v287
  %v1909 = vunpack.c.l.b16 %v288
  %v1910 = vunpack.c.h.b16 %v288
  %v1911 = vunpack.c.l.b16 %v289
  %v1912 = vunpack.c.h.b16 %v289
  %v1913 = vunpack.c.l.b16 %v290
  %v1914 = vunpack.c.h.b16 %v290
  %v1915 = vunpack.c.l.b16 %v291
  %v1916 = vunpack.c.h.b16 %v291
  %v1917 = vunpack.c.l.b16 %v292
  %v1918 = vunpack.c.h.b16 %v292
  %v1919 = vunpack.c.l.b16 %v293
  %v1920 = vunpack.c.h.b16 %v293
  %v1921 = vunpack.c.l.b16 %v294
  %v1922 = vunpack.c.h.b16 %v294
  %v1923 = vunpack.c.l.b16 %v295
  %v1924 = vunpack.c.h.b16 %v295
  %v1925 = vunpack.c.l.b16 %v296
  %v1926 = vunpack.c.h.b16 %v296
  %v1927 = vunpack.c.l.b16 %v297
  %v1928 = vunpack.c.h.b16 %v297
  %v1929 = vunpack.c.l.b16 %v298
  %v1930 = vunpack.c.h.b16 %v298
  %v1931 = vunpack.c.l.b16 %v299
  %v1932 = vunpack.c.h.b16 %v299
  %v1933 = vunpack.c.l.b16 %v300
  %v1934 = vunpack.c.h.b16 %v300
  %v1935 = vunpack.c.l.b16 %v301
  %v1936 = vunpack.c.h.b16 %v301
  %v1937 = vunpack.c.l.b16 %v302
  %v1938 = vunpack.c.h.b16 %v302
  %v1939 = vunpack.c.l.b16 %v303
  %v1940 = vunpack.c.h.b16 %v303
  %v1941 = vunpack.c.l.b16 %v304
  %v1942 = vunpack.c.h.b16 %v304
  %v1943 = vunpack.c.l.b16 %v305
  %v1944 = vunpack.c.h.b16 %v305
  %v1945 = vunpack.c.l.b16 %v306
  %v1946 = vunpack.c.h.b16 %v306
  %v1947 = vunpack.c.l.b16 %v307
  %v1948 = vunpack.c.h.b16 %v307
  %v1949 = vunpack.c.l.b16 %v308
  %v1950 = vunpack.c.h.b16 %v308
  %v1951 = vunpack.c.l.b16 %v309
  %v1952 = vunpack.c.h.b16 %v309
  %v1953 = vunpack.c.l.b16 %v310
  %v1954 = vunpack.c.h.b16 %v310
  %v1955 = vunpack.c.l.b16 %v311
  %v1956 = vunpack.c.h.b16 %v311
  %v1957 = vunpack.c.l.b16 %v312
  %v1958 = vunpack.c.h.b16 %v312
  %v1959 = vunpack.c.l.b16 %v313
  %v1960 = vunpack.c.h.b16 %v313
  %v1961 = vunpack.c.l.b16 %v314
  %v1962 = vunpack.c.h.b16 %v314
  %v1963 = vunpack.c.l.b16 %v315
  %v1964 = vunpack.c.h.b16 %v315
  %v1965 = vunpack.c.l.b16 %v316
  %v1966 = vunpack.c.h.b16 %v316
  %v1967 = vunpack.c.l.b16 %v317
  %v1968 = vunpack.c.h.b16 %v317
  %v1969 = vunpack.c.l.b16 %v318
  %v1970 = vunpack.c.h.b16 %v318
  %v1971 = vunpack.c.l.b16 %v319
  %v1972 = vunpack.c.h.b16 %v319
  %v1973 = vunpack.c.l.b16 %v320
  %v1974 = vunpack.c.h.b16 %v320
  %v1975 = vunpack.c.l.b16 %v321
  %v1976 = vunpack.c.h.b16 %v321
  %v1977 = vunpack.c.l.b16 %v322
  %v1978 = vunpack.c.h.b16 %v322
  %v1979 = vunpack.c.l.b16 %v323
  %v1980 = vunpack.c.h.b16 %v323
  %v1981 = vunpack.c.l.b16 %v324
  %v1982 = vunpack.c.h.b16 %v324
  %v1983 = vunpack.c.l.b16 %v325
  %v1984 = vunpack.c.h.b16 %v325
  %v1985 = vunpack.c.l.b16 %v326
  %v1986 = vunpack.c.h.b16 %v326
  %v1987 = vunpack.c.l.b16 %v327
  %v1988 = vunpack.c.h.b16 %v327
  %v1989 = vunpack.c.l.b16 %v328
  %v1990 = vunpack.c.h.b16 %v328
  %v1991 = vunpack.c.l.b16 %v329
  %v1992 = vunpack.c.h.b16 %v329
  %v1993 = vunpack.c.l.b16 %v330
  %v1994 = vunpack.c.h.b16 %v330
  %v1995 = vunpack.c.l.b16 %v331
  %v1996 = vunpack.c.h.b16 %v331
  %v1997 = vunpack.c.l.b16 %v332
  %v1998 = vunpack.c.h.b16 %v332
  %v1999 = vunpack.c.l.b16 %v333
  %v2000 = vunpack.c.h.b16 %v333
  %v2001 = vunpack.c.l.b16 %v334
  %v2002 = vunpack.c.h.b16 %v334
  %v2003 = vunpack.c.l.b16 %v335
  %v2004 = vunpack.c.h.b16 %v335
  %v2005 = vunpack.c.l.b16 %v336
  %v2006 = vunpack.c.h.b16 %v336
  %v2007 = vunpack.c.l.b16 %v337
  %v2008 = vunpack.c.h.b16 %v337
  %v2009 = vunpack.c.l.b16 %v338
  %v2010 = vunpack.c.h.b16 %v338
  %v2011 = vunpack.c.l.b16 %v339
  %v2012 = vunpack.c.h.b16 %v339
  %v2013 = vunpack.c.l.b16 %v340
  %v2014 = vunpack.c.h.b16 %v340
  %v2015 = vunpack.c.l.b16 %v341
  %v2016 = vunpack.c.h.b16 %v341
  %v2017 = vunpack.c.l.b16 %v342
  %v2018 = vunpack.c.h.b16 %v342
  %v2019 = vunpack.c.l.b16 %v343
  %v2020 = vunpack.c.h.b16 %v343
  %v2021 = vunpack.c.l.b16 %v344
  %v2022 = vunpack.c.h.b16 %v344
  %v2023 = vunpack.c.l.b16 %v345
  %v2024 = vunpack.c.h.b16 %v345
  %v2025 = vunpack.c.l.b16 %v346
  %v2026 = vunpack.c.h.b16 %v346
  %v2027 = vunpack.c.l.b16 %v347
  %v2028 = vunpack.c.h.b16 %v347
  %v2029 = vunpack.c.l.b16 %v348
  %v2030 = vunpack.c.h.b16 %v348
  %v2031 = vunpack.c.l.b16 %v349
  %v2032 = vunpack.c.h.b16 %v349
  %v2033 = vunpack.c.l.b16 %v350
  %v2034 = vunpack.c.h.b16 %v350
  %v2035 = vunpack.c.l.b16 %v351
  %v2036 = vunpack.c.h.b16 %v351
  %v2037 = vunpack.c.l.b16 %v352
  %v2038 = vunpack.c.h.b16 %v352
  %v2039 = vunpack.c.l.b16 %v353
  %v2040 = vunpack.c.h.b16 %v353
  %v2041 = vunpack.c.l.b16 %v354
  %v2042 = vunpack.c.h.b16 %v354
  %v2043 = vunpack.c.l.b16 %v355
  %v2044 = vunpack.c.h.b16 %v355
  %v2045 = vunpack.c.l.b16 %v356
  %v2046 = vunpack.c.h.b16 %v356
  %v2047 = vunpack.c.l.b16 %v357
  %v2048 = vunpack.c.h.b16 %v357
  %v2049 = vunpack.c.l.b16 %v358
  %v2050 = vunpack.c.h.b16 %v358
  %v2051 = vunpack.c.l.b16 %v359
  %v2052 = vunpack.c.h.b16 %v359
  %v2053 = vunpack.c.l.b16 %v360
  %v2054 = vunpack.c.h.b16 %v360
  %v2055 = vunpack.c.l.b16 %v361
  %v2056 = vunpack.c.h.b16 %v361
  %v2057 = vunpack.c.l.b16 %v362
  %v2058 = vunpack.c.h.b16 %v362
  %v2059 = vunpack.c.l.b16 %v363
  %v2060 = vunpack.c.h.b16 %v363
  %v2061 = vunpack.c.l.b16 %v364
  %v2062 = vunpack.c.h.b16 %v364
  %v2063 = vunpack.c.l.b16 %v365
  %v2064 = vunpack.c.h.b16 %v365
  %v2065 = vunpack.c.l.b16 %v366
  %v2066 = vunpack.c.h.b16 %v366
  %v2067 = vunpack.c.l.b16 %v367
  %v2068 = vunpack.c.h.b16 %v367
  %v2069 = vunpack.c.l.b16 %v368
  %v2070 = vunpack.c.h.b16 %v368
  %v2071 = vunpack.c.l.b16 %v369
  %v2072 = vunpack.c.h.b16 %v369
  %v2073 = vunpack.c.l.b16 %v370
  %v2074 = vunpack.c.h.b16 %v370
  %v2075 = vunpack.c.l.b16 %v371
  %v2076 = vunpack.c.h.b16 %v371
  %v2077 = vunpack.c.l.b16 %v372
  %v2078 = vunpack.c.h.b16 %v372
  %v2079 = vunpack.c.l.b16 %v373
  %v2080 = vunpack.c.h.b16 %v373
  %v2081 = vunpack.c.l.b16 %v374
  %v2082 = vunpack.c.h.b16 %v374
  %v2083 = vunpack.c.l.b16 %v375
  %v2084 = vunpack.c.h.b16 %v375
  %v2085 = vunpack.c.l.b16 %v376
  %v2086 = vunpack.c.h.b16 %v376
  %v2087 = vunpack.c.l.b16 %v377
  %v2088 = vunpack.c.h.b16 %v377
  %v2089 = vunpack.c.l.b16 %v378
  %v2090 = vunpack.c.h.b16 %v378
  %v2091 = vunpack.c.l.b16 %v379
  %v2092 = vunpack.c.h.b16 %v379
  %v2093 = vunpack.c.l.b16 %v380
  %v2094 = vunpack.c.h.b16 %v380
  %v2095 = vunpack.c.l.b16 %v381
  %v2096 = vunpack.c.h.b16 %v381
  %v2097 = vunpack.c.l.b16 %v382
  %v2098 = vunpack.c.h.b16 %v382
  %v2099 = vunpack.c.l.b16 %v383
  %v2100 = vunpack.c.h.b16 %v383
  %v2101 = vunpack.c.l.b16 %v384
  %v2102 = vunpack.c.h.b16 %v384
  %v2103 = vunpack.c.l.b16 %v385
  %v2104 = vunpack.c.h.b16 %v385
  %v2105 = vunpack.c.l.b16 %v386
  %v2106 = vunpack.c.h.b16 %v386
  %v2107 = vunpack.c.l.b16 %v387
  %v2108 = vunpack.c.h.b16 %v387
  %v2109 = vunpack.c.l.b16 %v388
  %v2110 = vunpack.c.h.b16 %v388
  %v2111 = vunpack.c.l.b16 %v389
  %v2112 = vunpack.c.h.b16 %v389
  %v2113 = vunpack.c.l.b16 %v390
  %v2114 = vunpack.c.h.b16 %v390
  %v2115 = vunpack.c.l.b16 %v391
  %v2116 = vunpack.c.h.b16 %v391
  %v2117 = vunpack.c.l.b16 %v392
  %v2118 = vunpack.c.h.b16 %v392
  %v2119 = vunpack.c.l.b16 %v393
  %v2120 = vunpack.c.h.b16 %v393
  %v2121 = vunpack.c.l.b16 %v394
  %v2122 = vunpack.c.h.b16 %v394
  %v2123 = vunpack.c.l.b16 %v395
  %v2124 = vunpack.c.h.b16 %v395
  %v2125 = vunpack.c.l.b16 %v396
  %v2126 = vunpack.c.h.b16 %v396
  %v2127 = vunpack.c.l.b16 %v397
  %v2128 = vunpack.c.h.b16 %v397
  %v2129 = vunpack.c.l.b16 %v398
  %v2130 = vunpack.c.h.b16 %v398
  %v2131 = vunpack.c.l.b16 %v399
  %v2132 = vunpack.c.h.b16 %v399
  %v2133 = vunpack.c.l.b16 %v400
  %v2134 = vunpack.c.h.b16 %v400
  %v2135 = vunpack.c.l.b16 %v401
  %v2136 = vunpack.c.h.b16 %v401
  %v2137 = vunpack.c.l.b16 %v402
  %v2138 = vunpack.c.h.b16 %v402
  %v2139 = vunpack.c.l.b16 %v403
  %v2140 = vunpack.c.h.b16 %v403
  %v2141 = vunpack.c.l.b16 %v404
  %v2142 = vunpack.c.h.b16 %v404
  %v2143 = vunpack.c.l.b16 %v405
  %v2144 = vunpack.c.h.b16 %v405
  %v2145 = vunpack.c.l.b16 %v406
  %v2146 = vunpack.c.h.b16 %v406
  %v2147 = vunpack.c.l.b16 %v407
  %v2148 = vunpack.c.h.b16 %v407
  %v2149 = vunpack.c.l.b16 %v408
  %v2150 = vunpack.c.h.b16 %v408
  %v2151 = vunpack.c.l.b16 %v409
  %v2152 = vunpack.c.h.b16 %v409
  %v2153 = vunpack.c.l.b16 %v410
  %v2154 = vunpack.c.h.b16 %v410
  %v2155 = vunpack.c.l.b16 %v411
  %v2156 = vunpack.c.h.b16 %v411
  %v2157 = vunpack.c.l.b16 %v412
  %v2158 = vunpack.c.h.b16 %v412
  %v2159 = vunpack.c.l.b16 %v413
  %v2160 = vunpack.c.h.b16 %v413
  %v2161 = vunpack.c.l.b16 %v414
  %v2162 = vunpack.c.h.b16 %v414
  %v2163 = vunpack.c.l.b16 %v415
  %v2164 = vunpack.c.h.b16 %v415
  %v2165 = vunpack.c.l.b16 %v416
  %v2166 = vunpack.c.h.b16 %v416
  %v2167 = vunpack.c.l.b16 %v417
  %v2168 = vunpack.c.h.b16 %v417
  %v2169 = vunpack.c.l.b16 %v418
  %v2170 = vunpack.c.h.b16 %v418
  %v2171 = vunpack.c.l.b16 %v419
  %v2172 = vunpack.c.h.b16 %v419
  %v2173 = vunpack.c.l.b16 %v420
  %v2174 = vunpack.c.h.b16 %v420
  %v2175 = vunpack.c.l.b16 %v421
  %v2176 = vunpack.c.h.b16 %v421
  %v2177 = vunpack.c.l.b16 %v422
  %v2178 = vunpack.c.h.b16 %v422
  %v2179 = vunpack.c.l.b16 %v423
  %v2180 = vunpack.c.h.b16 %v423
  %v2181 = vunpack.c.l.b16 %v424
  %v2182 = vunpack.c.h.b16 %v424
  %v2183 = vunpack.c.l.b16 %v425
  %v2184 = vunpack.c.h.b16 %v425
  %v2185 = vunpack.c.l.b16 %v426
  %v2186 = vunpack.c.h.b16 %v426
  %v2187 = vunpack.c.l.b16 %v427
  %v2188 = vunpack.c.h.b16 %v427
  %v2189 = vunpack.c.l.b16 %v428
  %v2190 = vunpack.c.h.b16 %v428
  %v2191 = vunpack.c.l.b16 %v429
  %v2192 = vunpack.c.h.b16 %v429
  %v2193 = vunpack.c.l.b16 %v430
  %v2194 = vunpack.c.h.b16 %v430
  %v2195 = vunpack.c.l.b16 %v431
  %v2196 = vunpack.c.h.b16 %v431
  %v2197 = vunpack.c.l.b16 %v432
  %v2198 = vunpack.c.h.b16 %v432
  %v2199 = vunpack.c.l.b16 %v433
  %v2200 = vunpack.c.h.b16 %v433
  %v2201 = vunpack.c.l.b16 %v434
  %v2202 = vunpack.c.h.b16 %v434
  %v2203 = vunpack.c.l.b16 %v435
  %v2204 = vunpack.c.h.b16 %v435
  %v2205 = vunpack.c.l.b16 %v436
  %v2206 = vunpack.c.h.b16 %v436
  %v2207 = vunpack.c.l.b16 %v437
  %v2208 = vunpack.c.h.b16 %v437
  %v2209 = vunpack.c.l.b16 %v438
  %v2210 = vunpack.c.h.b16 %v438
  %v2211 = vunpack.c.l.b16 %v439
  %v2212 = vunpack.c.h.b16 %v439
  %v2213 = vunpack.c.l.b16 %v440
  %v2214 = vunpack.c.h.b16 %v440
  %v2215 = vunpack.c.l.b16 %v441
  %v2216 = vunpack.c.h.b16 %v441
  %v2217 = vunpack.c.l.b16 %v442
  %v2218 = vunpack.c.h.b16 %v442
  %v2219 = vunpack.c.l.b16 %v443
  %v2220 = vunpack.c.h.b16 %v443
  %v2221 = vunpack.c.l.b16 %v444
  %v2222 = vunpack.c.h.b16 %v444
  %v2223 = vunpack.c.l.b16 %v445
  %v2224 = vunpack.c.h.b16 %v445
  %v2225 = vunpack.c.l.b16 %v446
  %v2226 = vunpack.c.h.b16 %v446
  %v2227 = vunpack.c.l.b16 %v447
  %v2228 = vunpack.c.h.b16 %v447
  %v2229 = vunpack.c.l.b16 %v448
  %v2230 = vunpack.c.h.b16 %v448
  %v2231 = vunpack.c.l.b16 %v449
  %v2232 = vunpack.c.h.b16 %v449
  %v2233 = vunpack.c.l.b16 %v450
  %v2234 = vunpack.c.h.b16 %v450
  %v2235 = vunpack.c.l.b16 %v451
  %v2236 = vunpack.c.h.b16 %v451
  %v2237 = vunpack.c.l.b16 %v452
  %v2238 = vunpack.c.h.b16 %v452
  %v2239 = vunpack.c.l.b16 %v453
  %v2240 = vunpack.c.h.b16 %v453
  %v2241 = vunpack.c.l.b16 %v454
  %v2242 = vunpack.c.h.b16 %v454
  %v2243 = vunpack.c.l.b16 %v455
  %v2244 = vunpack.c.h.b16 %v455
  %v2245 = vunpack.c.l.b16 %v456
  %v2246 = vunpack.c.h.b16 %v456
  %v2247 = vunpack.c.l.b16 %v457
  %v2248 = vunpack.c.h.b16 %v457
  %v2249 = vunpack.c.l.b16 %v458
  %v2250 = vunpack.c.h.b16 %v458
  %v2251 = vunpack.c.l.b16 %v459
  %v2252 = vunpack.c.h.b16 %v459
  %v2253 = vunpack.c.l.b16 %v460
  %v2254 = vunpack.c.h.b16 %v460
  %v2255 = vunpack.c.l.b16 %v461
  %v2256 = vunpack.c.h.b16 %v461
  %v2257 = vunpack.c.l.b16 %v462
  %v2258 = vunpack.c.h.b16 %v462
  %v2259 = vunpack.c.l.b16 %v463
  %v2260 = vunpack.c.h.b16 %v463
  %v2261 = vunpack.c.l.b16 %v464
  %v2262 = vunpack.c.h.b16 %v464
  %v2263 = vunpack.c.l.b16 %v465
  %v2264 = vunpack.c.h.b16 %v465
  %v2265 = vunpack.c.l.b16 %v466
  %v2266 = vunpack.c.h.b16 %v466
  %v2267 = vunpack.c.l.b16 %v467
  %v2268 = vunpack.c.h.b16 %v467
  %v2269 = vunpack.c.l.b16 %v468
  %v2270 = vunpack.c.h.b16 %v468
  %v2271 = vunpack.c.l.b16 %v469
  %v2272 = vunpack.c.h.b16 %v469
  %v2273 = vunpack.c.l.b16 %v470
  %v2274 = vunpack.c.h.b16 %v470
  %v2275 = vunpack.c.l.b16 %v471
  %v2276 = vunpack.c.h.b16 %v471
  %v2277 = vunpack.c.l.b16 %v472
  %v2278 = vunpack.c.h.b16 %v472
  %v2279 = vunpack.c.l.b16 %v473
  %v2280 = vunpack.c.h.b16 %v473
  %v2281 = vunpack.c.l.b16 %v474
  %v2282 = vunpack.c.h.b16 %v474
  %v2283 = vunpack.c.l.b16 %v475
  %v2284 = vunpack.c.h.b16 %v475
  %v2285 = vunpack.c.l.b16 %v476
  %v2286 = vunpack.c.h.b16 %v476
  %v2287 = vunpack.c.l.b16 %v477
  %v2288 = vunpack.c.h.b16 %v477
  %v2289 = vunpack.c.l.b16 %v478
  %v2290 = vunpack.c.h.b16 %v478
  %v2291 = vunpack.c.l.b16 %v479
  %v2292 = vunpack.c.h.b16 %v479
  %v2293 = vunpack.c.l.b16 %v480
  %v2294 = vunpack.c.h.b16 %v480
  %v2295 = vunpack.c.l.b16 %v481
  %v2296 = vunpack.c.h.b16 %v481
  %v2297 = vunpack.c.l.b16 %v482
  %v2298 = vunpack.c.h.b16 %v482
  %v2299 = vunpack.c.l.b16 %v483
  %v2300 = vunpack.c.h.b16 %v483
  %v2301 = vunpack.c.l.b16 %v484
  %v2302 = vunpack.c.h.b16 %v484
  %v2303 = vunpack.c.l.b16 %v485
  %v2304 = vunpack.c.h.b16 %v485
  %v2305 = vunpack.c.l.b16 %v486
  %v2306 = vunpack.c.h.b16 %v486
  %v2307 = vunpack.c.l.b16 %v487
  %v2308 = vunpack.c.h.b16 %v487
  %v2309 = vunpack.c.l.b16 %v488
  %v2310 = vunpack.c.h.b16 %v488
  %v2311 = vunpack.c.l.b16 %v489
  %v2312 = vunpack.c.h.b16 %v489
  %v2313 = vunpack.c.l.b16 %v490
  %v2314 = vunpack.c.h.b16 %v490
  %v2315 = vunpack.c.l.b16 %v491
  %v2316 = vunpack.c.h.b16 %v491
  %v2317 = vunpack.c.l.b16 %v492
  %v2318 = vunpack.c.h.b16 %v492
  %v2319 = vunpack.c.l.b16 %v493
  %v2320 = vunpack.c.h.b16 %v493
  %v2321 = vpack.c.b16 %v1747, %v1745
  %v2322 = vpack.c.b16 %v1748, %v1746
  %v2323 = vpack.c.b16 %v1751, %v1749
  %v2324 = vpack.c.b16 %v1752, %v1750
  %v2325 = vpack.c.b16 %v1755, %v1753
  %v2326 = vpack.c.b16 %v1756, %v1754
  %v2327 = vpack.c.b16 %v1759, %v1757
  %v2328 = vpack.c.b16 %v1760, %v1758
  %v2329 = vpack.c.b16 %v1763, %v1761
  %v2330 = vpack.c.b16 %v1764, %v1762
  %v2331 = vpack.c.b16 %v1767, %v1765
  %v2332 = vpack.c.b16 %v1768, %v1766
  %v2333 = vpack.c.b16 %v1771, %v1769
  %v2334 = vpack.c.b16 %v1772, %v1770
  %v2335 = vpack.c.b16 %v1775, %v1773
  %v2336 = vpack.c.b16 %v1776, %v1774
  %v2337 = vpack.c.b16 %v1779, %v1777
  %v2338 = vpack.c.b16 %v1780, %v1778
  %v2339 = vpack.c.b16 %v1783, %v1781
  %v2340 = vpack.c.b16 %v1784, %v1782
  %v2341 = vpack.c.b16 %v1787, %v1785
  %v2342 = vpack.c.b16 %v1788, %v1786
  %v2343 = vpack.c.b16 %v1791, %v1789
  %v2344 = vpack.c.b16 %v1792, %v1790
  %v2345 = vpack.c.b16 %v1795, %v1793
  %v2346 = vpack.c.b16 %v1796, %v1794
  %v2347 = vpack.c.b16 %v1799, %v1797
  %v2348 = vpack.c.b16 %v1800, %v1798
  %v2349 = vpack.c.b16 %v1803, %v1801
  %v2350 = vpack.c.b16 %v1804, %v1802
  %v2351 = vpack.c.b16 %v1807, %v1805
  %v2352 = vpack.c.b16 %v1808, %v1806
  %v2353 = vpack.c.b16 %v1811, %v1809
  %v2354 = vpack.c.b16 %v1812, %v1810
  %v2355 = vpack.c.b16 %v1815, %v1813
  %v2356 = vpack.c.b16 %v1816, %v1814
  %v2357 = vpack.c.b16 %v1819, %v1817
  %v2358 = vpack.c.b16 %v1820, %v1818
  %v2359 = vpack.c.b16 %v1823, %v1821
  %v2360 = vpack.c.b16 %v1824, %v1822
  %v2361 = vpack.c.b16 %v1827, %v1825
  %v2362 = vpack.c.b16 %v1828, %v1826
  %v2363 = vpack.c.b16 %v1831, %v1829
  %v2364 = vpack.c.b16 %v1832, %v1830
  %v2365 = vpack.c.b16 %v1835, %v1833
  %v2366 = vpack.c.b16 %v1836, %v1834
  %v2367 = vpack.c.b16 %v1839, %v1837
  %v2368 = vpack.c.b16 %v1840, %v1838
  %v2369 = vpack.c.b16 %v1843, %v1841
  %v2370 = vpack.c.b16 %v1844, %v1842
  %v2371 = vpack.c.b16 %v1847, %v1845
  %v2372 = vpack.c.b16 %v1848, %v1846
  %v2373 = vpack.c.b16 %v1851, %v1849
  %v2374 = vpack.c.b16 %v1852, %v1850
  %v2375 = vpack.c.b16 %v1855, %v1853
  %v2376 = vpack.c.b16 %v1856, %v1854
  %v2377 = vpack.c.b16 %v1859, %v1857
  %v2378 = vpack.c.b16 %v1860, %v1858
  %v2379 = vpack.c.b16 %v1863, %v1861
  %v2380 = vpack.c.b16 %v1864, %v1862
  %v2381 = vpack.c.b16 %v1867, %v1865
  %v2382 = vpack.c.b16 %v1868, %v1866
  %v2383 = vpack.c.b16 %v1871, %v1869
  %v2384 = vpack.c.b16 %v1872, %v1870
  %v2385 = vpack.c.b16 %v1875, %v1873
  %v2386 = vpack.c.b16 %v1876, %v1874
  %v2387 = vpack.c.b16 %v1879, %v1877
  %v2388 = vpack.c.b16 %v1880, %v1878
  %v2389 = vpack.c.b16 %v1883, %v1881
  %v2390 = vpack.c.b16 %v1884, %v1882
  %v2391 = vpack.c.b16 %v1887, %v1885
  %v2392 = vpack.c.b16 %v1888, %v1886
  %v2393 = vpack.c.b16 %v1891, %v1889
  %v2394 = vpack.c.b16 %v1892, %v1890
  %v2395 = vpack.c.b16 %v1895, %v1893
  %v2396 = vpack.c.b16 %v1896, %v1894
  %v2397 = vpack.c.b16 %v1899, %v1897
  %v2398 = vpack.c.b16 %v1900, %v1898
  %v2399 = vpack.c.b16 %v1903, %v1901
  %v2400 = vpack.c.b16 %v1904, %v1902
  %v2401 = vpack.c.b16 %v1907, %v1905
  %v2402 = vpack.c.b16 %v1908, %v1906
  %v2403 = vpack.c.b16 %v1911, %v1909
  %v2404 = vpack.c.b16 %v1912, %v1910
  %v2405 = vpack.c.b16 %v1915, %v1913
  %v2406 = vpack.c.b16 %v1916, %v1914
  %v2407 = vpack.c.b16 %v1919, %v1917
  %v2408 = vpack.c.b16 %v1920, %v1918
  %v2409 = vpack.c.b16 %v1923, %v1921
  %v2410 = vpack.c.b16 %v1924, %v1922
  %v2411 = vpack.c.b16 %v1927, %v1925
  %v2412 = vpack.c.b16 %v1928, %v1926
  %v2413 = vpack.c.b16 %v1931, %v1929
  %v2414 = vpack.c.b16 %v1932, %v1930
  %v2415 = vpack.c.b16 %v1935, %v1933
  %v2416 = vpack.c.b16 %v1936, %v1934
  %v2417 = vpack.c.b16 %v1939, %v1937
  %v2418 = vpack.c.b16 %v1940, %v1938
  %v2419 = vpack.c.b16 %v1943, %v1941
  %v2420 = vpack.c.b16 %v1944, %v1942
  %v2421 = vpack.c.b16 %v1947, %v1945
  %v2422 = vpack.c.b16 %v1948, %v1946
  %v2423 = vpack.c.b16 %v1951, %v1949
  %v2424 = vpack.c.b16 %v1952, %v1950
  %v2425 = vpack.c.b16 %v1955, %v1953
  %v2426 = vpack.c.b16 %v1956, %v1954
  %v2427 = vpack.c.b16 %v1959, %v1957
  %v2428 = vpack.c.b16 %v1960, %v1958
  %v2429 = vpack.c.b16 %v1963, %v1961
  %v2430 = vpack.c.b16 %v1964, %v1962
  %v2431 = vpack.c.b16 %v1967, %v1965
  %v2432 = vpack.c.b16 %v1968, %v1966
  %v2433 = vpack.c.b16 %v1971, %v1969
  %v2434 = vpack.c.b16 %v1972, %v1970
  %v2435 = vpack.c.b16 %v1975, %v1973
  %v2436 = vpack.c.b16 %v1976, %v1974
  %v2437 = vpack.c.b16 %v1979, %v1977
  %v2438 = vpack.c.b16 %v1980, %v1978
  %v2439 = vpack.c.b16 %v1983, %v1981
  %v2440 = vpack.c.b16 %v1984, %v1982
  %v2441 = vpack.c.b16 %v1987, %v1985
  %v2442 = vpack.c.b16 %v1988, %v1986
  %v2443 = vpack.c.b16 %v1991, %v1989
  %v2444 = vpack.c.b16 %v1992, %v1990
  %v2445 = vpack.c.b16 %v1995, %v1993
  %v2446 = vpack.c.b16 %v1996, %v1994
  %v2447 = vpack.c.b16 %v1999, %v1997
  %v2448 = vpack.c.b16 %v2000, %v1998
  %v2449 = vpack.c.b16 %v2003, %v2001
  %v2450 = vpack.c.b16 %v2004, %v2002
  %v2451 = vpack.c.b16 %v2007, %v2005
  %v2452 = vpack.c.b16 %v2008, %v2006
  %v2453 = vpack.c.b16 %v2011, %v2009
  %v2454 = vpack.c.b16 %v2012, %v2010
  %v2455 = vpack.c.b16 %v2015, %v2013
  %v2456 = vpack.c.b16 %v2016, %v2014
  %v2457 = vpack.c.b16 %v2019, %v2017
  %v2458 = vpack.c.b16 %v2020, %v2018
  %v2459 = vpack.c.b16 %v2023, %v2021
  %v2460 = vpack.c.b16 %v2024, %v2022
  %v2461 = vpack.c.b16 %v2027, %v2025
  %v2462 = vpack.c.b16 %v2028, %v2026
  %v2463 = vpack.c.b16 %v2031, %v2029
  %v2464 = vpack.c.b16 %v2032, %v2030
  %v2465 = vpack.c.b16 %v2035, %v2033
  %v2466 = vpack.c.b16 %v2036, %v2034
  %v2467 = vpack.c.b16 %v2039, %v2037
  %v2468 = vpack.c.b16 %v2040, %v2038
  %v2469 = vpack.c.b16 %v2043, %v2041
  %v2470 = vpack.c.b16 %v2044, %v2042
  %v2471 = vpack.c.b16 %v2047, %v2045
  %v2472 = vpack.c.b16 %v2048, %v2046
  %v2473 = vpack.c.b16 %v2051, %v2049
  %v2474 = vpack.c.b16 %v2052, %v2050
  %v2475 = vpack.c.b16 %v2055, %v2053
  %v2476 = vpack.c.b16 %v2056, %v2054
  %v2477 = vpack.c.b16 %v2059, %v2057
  %v2478 = vpack.c.b16 %v2060, %v2058
  %v2479 = vpack.c.b16 %v2063, %v2061
  %v2480 = vpack.c.b16 %v2064, %v2062
  %v2481 = vpack.c.b16 %v2067, %v2065
  %v2482 = vpack.c.b16 %v2068, %v2066
  %v2483 = vpack.c.b16 %v2071, %v2069
  %v2484 = vpack.c.b16 %v2072, %v2070
  %v2485 = vpack.c.b16 %v2075, %v2073
  %v2486 = vpack.c.b16 %v2076, %v2074
  %v2487 = vpack.c.b16 %v2079, %v2077
  %v2488 = vpack.c.b16 %v2080, %v2078
  %v2489 = vpack.c.b16 %v2083, %v2081
  %v2490 = vpack.c.b16 %v2084, %v2082
  %v2491 = vpack.c.b16 %v2087, %v2085
  %v2492 = vpack.c.b16 %v2088, %v2086
  %v2493 = vpack.c.b16 %v2091, %v2089
  %v2494 = vpack.c.b16 %v2092, %v2090
  %v2495 = vpack.c.b16 %v2095, %v2093
  %v2496 = vpack.c.b16 %v2096, %v2094
  %v2497 = vpack.c.b16 %v2099, %v2097
  %v2498 = vpack.c.b16 %v2100, %v2098
  %v2499 = vpack.c.b16 %v2103, %v2101
  %v2500 = vpack.c.b16 %v2104, %v2102
  %v2501 = vpack.c.b16 %v2107, %v2105
  %v2502 = vpack.c.b16 %v2108, %v2106
  %v2503 = vpack.c.b16 %v2111, %v2109
  %v2504 = vpack.c.b16 %v2112, %v2110
  %v2505 = vpack.c.b16 %v2115, %v2113
  %v2506 = vpack.c.b16 %v2116, %v2114
  %v2507 = vpack.c.b16 %v2119, %v2117
  %v2508 = vpack.c.b16 %v2120, %v2118
  %v2509 = vpack.c.b16 %v2123, %v2121
  %v2510 = vpack.c.b16 %v2124, %v2122
  %v2511 = vpack.c.b16 %v2127, %v2125
  %v2512 = vpack.c.b16 %v2128, %v2126
  %v2513 = vpack.c.b16 %v2131, %v2129
  %v2514 = vpack.c.b16 %v2132, %v2130
  %v2515 = vpack.c.b16 %v2135, %v2133
  %v2516 = vpack.c.b16 %v2136, %v2134
  %v2517 = vpack.c.b16 %v2139, %v2137
  %v2518 = vpack.c.b16 %v2140, %v2138
  %v2519 = vpack.c.b16 %v2143, %v2141
  %v2520 = vpack.c.b16 %v2144, %v2142
  %v2521 = vpack.c.b16 %v2147, %v2145
  %v2522 = vpack.c.b16 %v2148, %v2146
  %v2523 = vpack.c.b16 %v2151, %v2149
  %v2524 = vpack.c.b16 %v2152, %v2150
  %v2525 = vpack.c.b16 %v2155, %v2153
  %v2526 = vpack.c.b16 %v2156, %v2154
  %v2527 = vpack.c.b16 %v2159, %v2157
  %v2528 = vpack.c.b16 %v2160, %v2158
  %v2529 = vpack.c.b16 %v2163, %v2161
  %v2530 = vpack.c.b16 %v2164, %v2162
  %v2531 = vpack.c.b16 %v2167, %v2165
  %v2532 = vpack.c.b16 %v2168, %v2166
  %v2533 = vpack.c.b16 %v2171, %v2169
  %v2534 = vpack.c.b16 %v2172, %v2170
  %v2535 = vpack.c.b16 %v2175, %v2173
  %v2536 = vpack.c.b16 %v2176, %v2174
  %v2537 = vpack.c.b16 %v2179, %v2177
  %v2538 = vpack.c.b16 %v2180, %v2178
  %v2539 = vpack.c.b16 %v2183, %v2181
  %v2540 = vpack.c.b16 %v2184, %v2182
  %v2541 = vpack.c.b16 %v2187, %v2185
  %v2542 = vpack.c.b16 %v2188, %v2186
  %v2543 = vpack.c.b16 %v2191, %v2189
  %v2544 = vpack.c.b16 %v2192, %v2190
  %v2545 = vpack.c.b16 %v2195, %v2193
  %v2546 = vpack.c.b16 %v2196, %v2194
  %v2547 = vpack.c.b16 %v2199, %v2197
  %v2548 = vpack.c.b16 %v2200, %v2198
  %v2549 = vpack.c.b16 %v2203, %v2201
  %v2550 = vpack.c.b16 %v2204, %v2202
  %v2551 = vpack.c.b16 %v2207, %v2205
  %v2552 = vpack.c.b16 %v2208, %v2206
  %v2553 = vpack.c.b16 %v2211, %v2209
  %v2554 = vpack.c.b16 %v2212, %v2210
  %v2555 = vpack.c.b16 %v2215, %v2213
  %v2556 = vpack.c.b16 %v2216, %v2214
  %v2557 = vpack.c.b16 %v2219, %v2217
  %v2558 = vpack.c.b16 %v2220, %v2218
  %v2559 = vpack.c.b16 %v2223, %v2221
  %v2560 = vpack.c.b16 %v2224, %v2222
  %v2561 = vpack.c.b16 %v2227, %v2225
  %v2562 = vpack.c.b16 %v2228, %v2226
  %v2563 = vpack.c.b16 %v2231, %v2229
  %v2564 = vpack.c.b16 %v2232, %v2230
  %v2565 = vpack.c.b16 %v2235, %v2233
  %v2566 = vpack.c.b16 %v2236, %v2234
  %v2567 = vpack.c.b16 %v2239, %v2237
  %v2568 = vpack.c.b16 %v2240, %v2238
  %v2569 = vpack.c.b16 %v2243, %v2241
  %v2570 = vpack.c.b16 %v2244, %v2242
  %v2571 = vpack.c.b16 %v2247, %v2245
  %v2572 = vpack.c.b16 %v2248, %v2246
  %v2573 = vpack.c.b16 %v2251, %v2249
  %v2574 = vpack.c.b16 %v2252, %v2250
  %v2575 = vpack.c.b16 %v2255, %v2253
  %v2576 = vpack.c.b16 %v2256, %v2254
  %v2577 = vpack.c.b16 %v2259, %v2257
  %v2578 = vpack.c.b16 %v2260, %v2258
  %v2579 = vpack.c.b16 %v2263, %v2261
  %v2580 = vpack.c.b16 %v2264, %v2262
  %v2581 = vpack.c.b16 %v2267, %v2265
  %v2582 = vpack.c.b16 %v2268, %v2266
  %v2583 = vpack.c.b16 %v2271, %v2269
  %v2584 = vpack.c.b16 %v2272, %v2270
  %v2585 = vpack.c.b16 %v2275, %v2273
  %v2586 = vpack.c.b16 %v2276, %v2274
  %v2587 = vpack.c.b16 %v2279, %v2277
  %v2588 = vpack.c.b16 %v2280, %v2278
  %v2589 = vpack.c.b16 %v2283, %v2281
  %v2590 = vpack.c.b16 %v2284, %v2282
  %v2591 = vpack.c.b16 %v2287, %v2285
  %v2592 = vpack.c.b16 %v2288, %v2286
  %v2593 = vpack.c.b16 %v2291, %v2289
  %v2594 = vpack.c.b16 %v2292, %v2290
  %v2595 = vpack.c.b16 %v2295, %v2293
  %v2596 = vpack.c.b16 %v2296, %v2294
  %v2597 = vpack.c.b16 %v2299, %v2297
  %v2598 = vpack.c.b16 %v2300, %v2298
  %v2599 = vpack.c.b16 %v2303, %v2301
  %v2600 = vpack.c.b16 %v2304, %v2302
  %v2601 = vpack.c.b16 %v2307, %v2305
  %v2602 = vpack.c.b16 %v2308, %v2306
  %v2603 = vpack.c.b16 %v2311, %v2309
  %v2604 = vpack.c.b16 %v2312, %v2310
  %v2605 = vpack.c.b16 %v2315, %v2313
  %v2606 = vpack.c.b16 %v2316, %v2314
  %v2607 = vpack.c.b16 %v2319, %v2317
  %v2608 = vpack.c.b16 %v2320, %v2318
  %2897 = vmatpush.bf16.msra.mxu0 %v2335
  %2898 = vmatpush.bf16.msra.mxu0 %v2333
  %2899 = vmatpush.bf16.msra.mxu0 %v2331
  %2900 = vmatpush.bf16.msra.mxu0 %v2329
  %2901 = vmatpush.bf16.msra.mxu0 %v2327
  %2902 = vmatpush.bf16.msra.mxu0 %v2325
  %2903 = vmatpush.bf16.msra.mxu0 %v2323
  %2904 = vmatpush.bf16.msra.mxu0 %v2321
  %2905 = vmatmul.bf16.gmra.mxu0 %v1061
  %v2906 = vpop.f32.mrf.mxu0
  %v2907 = vadd.f32 0.0, %v2906
  %v2908 = vpop.f32.mrf.mxu0
  %v2909 = vadd.f32 0.0, %v2908
  %2910 = vmatmul.bf16.gmra.mxu0 %v1079
  %v2911 = vpop.f32.mrf.mxu0
  %v2912 = vadd.f32 0.0, %v2911
  %v2913 = vpop.f32.mrf.mxu0
  %v2914 = vadd.f32 0.0, %v2913
  %2915 = vmatmul.bf16.gmra.mxu0 %v1097
  %v2916 = vpop.f32.mrf.mxu0
  %v2917 = vadd.f32 0.0, %v2916
  %v2918 = vpop.f32.mrf.mxu0
  %v2919 = vadd.f32 0.0, %v2918
  %2920 = vmatmul.bf16.gmra.mxu0 %v1115
  %v2921 = vpop.f32.mrf.mxu0
  %v2922 = vadd.f32 0.0, %v2921
  %v2923 = vpop.f32.mrf.mxu0
  %v2924 = vadd.f32 0.0, %v2923
  %2925 = vmatmul.bf16.gmra.mxu0 %v1133
  %v2926 = vpop.f32.mrf.mxu0
  %v2927 = vadd.f32 0.0, %v2926
  %v2928 = vpop.f32.mrf.mxu0
  %v2929 = vadd.f32 0.0, %v2928
  %2930 = vmatmul.bf16.gmra.mxu0 %v1151
  %v2931 = vpop.f32.mrf.mxu0
  %v2932 = vadd.f32 0.0, %v2931
  %v2933 = vpop.f32.mrf.mxu0
  %v2934 = vadd.f32 0.0, %v2933
  %2935 = vmatmul.bf16.gmra.mxu0 %v1169
  %v2936 = vpop.f32.mrf.mxu0
  %v2937 = vadd.f32 0.0, %v2936
  %v2938 = vpop.f32.mrf.mxu0
  %v2939 = vadd.f32 0.0, %v2938
  %2940 = vmatmul.bf16.gmra.mxu0 %v1187
  %v2941 = vpop.f32.mrf.mxu0
  %v2942 = vadd.f32 0.0, %v2941
  %v2943 = vpop.f32.mrf.mxu0
  %v2944 = vadd.f32 0.0, %v2943
  %2945 = vmatmul.bf16.gmra.mxu0 %v1205
  %v2946 = vpop.f32.mrf.mxu0
  %v2947 = vadd.f32 0.0, %v2946
  %v2948 = vpop.f32.mrf.mxu0
  %v2949 = vadd.f32 0.0, %v2948
  %2950 = vmatmul.bf16.gmra.mxu0 %v1223
  %v2951 = vpop.f32.mrf.mxu0
  %v2952 = vadd.f32 0.0, %v2951
  %v2953 = vpop.f32.mrf.mxu0
  %v2954 = vadd.f32 0.0, %v2953
  %2955 = vmatmul.bf16.gmra.mxu0 %v1241
  %v2956 = vpop.f32.mrf.mxu0
  %v2957 = vadd.f32 0.0, %v2956
  %v2958 = vpop.f32.mrf.mxu0
  %2959 = vdwg.mxu0
  %2960 = vmatpush.bf16.msra.mxu0 %v2351
  %2961 = vmatpush.bf16.msra.mxu0 %v2349
  %2962 = vmatpush.bf16.msra.mxu0 %v2347
  %2963 = vmatpush.bf16.msra.mxu0 %v2345
  %2964 = vmatpush.bf16.msra.mxu0 %v2343
  %2965 = vmatpush.bf16.msra.mxu0 %v2341
  %2966 = vmatpush.bf16.msra.mxu0 %v2339
  %2967 = vmatpush.bf16.msra.mxu0 %v2337
  %2968 = vmatmul.bf16.gmra.mxu0 %v1062
  %v2969 = vpop.f32.mrf.mxu0
  %v2970 = vadd.f32 %v2907, %v2969
  %v2971 = vpop.f32.mrf.mxu0
  %v2972 = vadd.f32 %v2909, %v2971
  %2973 = vmatmul.bf16.gmra.mxu0 %v1080
  %v2974 = vpop.f32.mrf.mxu0
  %v2975 = vadd.f32 %v2912, %v2974
  %v2976 = vpop.f32.mrf.mxu0
  %v2977 = vadd.f32 %v2914, %v2976
  %2978 = vmatmul.bf16.gmra.mxu0 %v1098
  %v2979 = vpop.f32.mrf.mxu0
  %v2980 = vadd.f32 %v2917, %v2979
  %v2981 = vpop.f32.mrf.mxu0
  %v2982 = vadd.f32 %v2919, %v2981
  %2983 = vmatmul.bf16.gmra.mxu0 %v1116
  %v2984 = vpop.f32.mrf.mxu0
  %v2985 = vadd.f32 %v2922, %v2984
  %v2986 = vpop.f32.mrf.mxu0
  %v2987 = vadd.f32 %v2924, %v2986
  %2988 = vmatmul.bf16.gmra.mxu0 %v1134
  %v2989 = vpop.f32.mrf.mxu0
  %v2990 = vadd.f32 %v2927, %v2989
  %v2991 = vpop.f32.mrf.mxu0
  %v2992 = vadd.f32 %v2929, %v2991
  %2993 = vmatmul.bf16.gmra.mxu0 %v1152
  %v2994 = vpop.f32.mrf.mxu0
  %v2995 = vadd.f32 %v2932, %v2994
  %v2996 = vpop.f32.mrf.mxu0
  %v2997 = vadd.f32 %v2934, %v2996
  %2998 = vmatmul.bf16.gmra.mxu0 %v1170
  %v2999 = vpop.f32.mrf.mxu0
  %v3000 = vadd.f32 %v2937, %v2999
  %v3001 = vpop.f32.mrf.mxu0
  %v3002 = vadd.f32 %v2939, %v3001
  %3003 = vmatmul.bf16.gmra.mxu0 %v1188
  %v3004 = vpop.f32.mrf.mxu0
  %v3005 = vadd.f32 %v2942, %v3004
  %v3006 = vpop.f32.mrf.mxu0
  %v3007 = vadd.f32 %v2944, %v3006
  %3008 = vmatmul.bf16.gmra.mxu0 %v1206
  %v3009 = vpop.f32.mrf.mxu0
  %v3010 = vadd.f32 %v2947, %v3009
  %v3011 = vpop.f32.mrf.mxu0
  %v3012 = vadd.f32 %v2949, %v3011
  %3013 = vmatmul.bf16.gmra.mxu0 %v1224
  %v3014 = vpop.f32.mrf.mxu0
  %v3015 = vadd.f32 %v2952, %v3014
  %v3016 = vpop.f32.mrf.mxu0
  %v3017 = vadd.f32 %v2954, %v3016
  %3018 = vmatmul.bf16.gmra.mxu0 %v1242
  %v3019 = vpop.f32.mrf.mxu0
  %v3020 = vadd.f32 %v2957, %v3019
  %v3021 = vpop.f32.mrf.mxu0
  %3022 = vdwg.mxu0
  %3023 = vmatpush.bf16.msra.mxu0 %v2367
  %3024 = vmatpush.bf16.msra.mxu0 %v2365
  %3025 = vmatpush.bf16.msra.mxu0 %v2363
  %3026 = vmatpush.bf16.msra.mxu0 %v2361
  %3027 = vmatpush.bf16.msra.mxu0 %v2359
  %3028 = vmatpush.bf16.msra.mxu0 %v2357
  %3029 = vmatpush.bf16.msra.mxu0 %v2355
  %3030 = vmatpush.bf16.msra.mxu0 %v2353
  %3031 = vmatmul.bf16.gmra.mxu0 %v1063
  %v3032 = vpop.f32.mrf.mxu0
  %v3033 = vadd.f32 %v2970, %v3032
  %v3034 = vpop.f32.mrf.mxu0
  %v3035 = vadd.f32 %v2972, %v3034
  %3036 = vmatmul.bf16.gmra.mxu0 %v1081
  %v3037 = vpop.f32.mrf.mxu0
  %v3038 = vadd.f32 %v2975, %v3037
  %v3039 = vpop.f32.mrf.mxu0
  %v3040 = vadd.f32 %v2977, %v3039
  %3041 = vmatmul.bf16.gmra.mxu0 %v1099
  %v3042 = vpop.f32.mrf.mxu0
  %v3043 = vadd.f32 %v2980, %v3042
  %v3044 = vpop.f32.mrf.mxu0
  %v3045 = vadd.f32 %v2982, %v3044
  %3046 = vmatmul.bf16.gmra.mxu0 %v1117
  %v3047 = vpop.f32.mrf.mxu0
  %v3048 = vadd.f32 %v2985, %v3047
  %v3049 = vpop.f32.mrf.mxu0
  %v3050 = vadd.f32 %v2987, %v3049
  %3051 = vmatmul.bf16.gmra.mxu0 %v1135
  %v3052 = vpop.f32.mrf.mxu0
  %v3053 = vadd.f32 %v2990, %v3052
  %v3054 = vpop.f32.mrf.mxu0
  %v3055 = vadd.f32 %v2992, %v3054
  %3056 = vmatmul.bf16.gmra.mxu0 %v1153
  %v3057 = vpop.f32.mrf.mxu0
  %v3058 = vadd.f32 %v2995, %v3057
  %v3059 = vpop.f32.mrf.mxu0
  %v3060 = vadd.f32 %v2997, %v3059
  %3061 = vmatmul.bf16.gmra.mxu0 %v1171
  %v3062 = vpop.f32.mrf.mxu0
  %v3063 = vadd.f32 %v3000, %v3062
  %v3064 = vpop.f32.mrf.mxu0
  %v3065 = vadd.f32 %v3002, %v3064
  %3066 = vmatmul.bf16.gmra.mxu0 %v1189
  %v3067 = vpop.f32.mrf.mxu0
  %v3068 = vadd.f32 %v3005, %v3067
  %v3069 = vpop.f32.mrf.mxu0
  %v3070 = vadd.f32 %v3007, %v3069
  %3071 = vmatmul.bf16.gmra.mxu0 %v1207
  %v3072 = vpop.f32.mrf.mxu0
  %v3073 = vadd.f32 %v3010, %v3072
  %v3074 = vpop.f32.mrf.mxu0
  %v3075 = vadd.f32 %v3012, %v3074
  %3076 = vmatmul.bf16.gmra.mxu0 %v1225
  %v3077 = vpop.f32.mrf.mxu0
  %v3078 = vadd.f32 %v3015, %v3077
  %v3079 = vpop.f32.mrf.mxu0
  %v3080 = vadd.f32 %v3017, %v3079
  %3081 = vmatmul.bf16.gmra.mxu0 %v1243
  %v3082 = vpop.f32.mrf.mxu0
  %v3083 = vadd.f32 %v3020, %v3082
  %v3084 = vpop.f32.mrf.mxu0
  %3085 = vdwg.mxu0
  %3086 = vmatpush.bf16.msra.mxu0 %v2383
  %3087 = vmatpush.bf16.msra.mxu0 %v2381
  %3088 = vmatpush.bf16.msra.mxu0 %v2379
  %3089 = vmatpush.bf16.msra.mxu0 %v2377
  %3090 = vmatpush.bf16.msra.mxu0 %v2375
  %3091 = vmatpush.bf16.msra.mxu0 %v2373
  %3092 = vmatpush.bf16.msra.mxu0 %v2371
  %3093 = vmatpush.bf16.msra.mxu0 %v2369
  %3094 = vmatmul.bf16.gmra.mxu0 %v1064
  %v3095 = vpop.f32.mrf.mxu0
  %v3096 = vadd.f32 %v3033, %v3095
  %v3097 = vpop.f32.mrf.mxu0
  %v3098 = vadd.f32 %v3035, %v3097
  %3099 = vmatmul.bf16.gmra.mxu0 %v1082
  %v3100 = vpop.f32.mrf.mxu0
  %v3101 = vadd.f32 %v3038, %v3100
  %v3102 = vpop.f32.mrf.mxu0
  %v3103 = vadd.f32 %v3040, %v3102
  %3104 = vmatmul.bf16.gmra.mxu0 %v1100
  %v3105 = vpop.f32.mrf.mxu0
  %v3106 = vadd.f32 %v3043, %v3105
  %v3107 = vpop.f32.mrf.mxu0
  %v3108 = vadd.f32 %v3045, %v3107
  %3109 = vmatmul.bf16.gmra.mxu0 %v1118
  %v3110 = vpop.f32.mrf.mxu0
  %v3111 = vadd.f32 %v3048, %v3110
  %v3112 = vpop.f32.mrf.mxu0
  %v3113 = vadd.f32 %v3050, %v3112
  %3114 = vmatmul.bf16.gmra.mxu0 %v1136
  %v3115 = vpop.f32.mrf.mxu0
  %v3116 = vadd.f32 %v3053, %v3115
  %v3117 = vpop.f32.mrf.mxu0
  %v3118 = vadd.f32 %v3055, %v3117
  %3119 = vmatmul.bf16.gmra.mxu0 %v1154
  %v3120 = vpop.f32.mrf.mxu0
  %v3121 = vadd.f32 %v3058, %v3120
  %v3122 = vpop.f32.mrf.mxu0
  %v3123 = vadd.f32 %v3060, %v3122
  %3124 = vmatmul.bf16.gmra.mxu0 %v1172
  %v3125 = vpop.f32.mrf.mxu0
  %v3126 = vadd.f32 %v3063, %v3125
  %v3127 = vpop.f32.mrf.mxu0
  %v3128 = vadd.f32 %v3065, %v3127
  %3129 = vmatmul.bf16.gmra.mxu0 %v1190
  %v3130 = vpop.f32.mrf.mxu0
  %v3131 = vadd.f32 %v3068, %v3130
  %v3132 = vpop.f32.mrf.mxu0
  %v3133 = vadd.f32 %v3070, %v3132
  %3134 = vmatmul.bf16.gmra.mxu0 %v1208
  %v3135 = vpop.f32.mrf.mxu0
  %v3136 = vadd.f32 %v3073, %v3135
  %v3137 = vpop.f32.mrf.mxu0
  %v3138 = vadd.f32 %v3075, %v3137
  %3139 = vmatmul.bf16.gmra.mxu0 %v1226
  %v3140 = vpop.f32.mrf.mxu0
  %v3141 = vadd.f32 %v3078, %v3140
  %v3142 = vpop.f32.mrf.mxu0
  %v3143 = vadd.f32 %v3080, %v3142
  %3144 = vmatmul.bf16.gmra.mxu0 %v1244
  %v3145 = vpop.f32.mrf.mxu0
  %v3146 = vadd.f32 %v3083, %v3145
  %v3147 = vpop.f32.mrf.mxu0
  %3148 = vdwg.mxu0
  %3149 = vmatpush.bf16.msra.mxu0 %v2399
  %3150 = vmatpush.bf16.msra.mxu0 %v2397
  %3151 = vmatpush.bf16.msra.mxu0 %v2395
  %3152 = vmatpush.bf16.msra.mxu0 %v2393
  %3153 = vmatpush.bf16.msra.mxu0 %v2391
  %3154 = vmatpush.bf16.msra.mxu0 %v2389
  %3155 = vmatpush.bf16.msra.mxu0 %v2387
  %3156 = vmatpush.bf16.msra.mxu0 %v2385
  %3157 = vmatmul.bf16.gmra.mxu0 %v1065
  %v3158 = vpop.f32.mrf.mxu0
  %v3159 = vadd.f32 %v3096, %v3158
  %v3160 = vpop.f32.mrf.mxu0
  %v3161 = vadd.f32 %v3098, %v3160
  %3162 = vmatmul.bf16.gmra.mxu0 %v1083
  %v3163 = vpop.f32.mrf.mxu0
  %v3164 = vadd.f32 %v3101, %v3163
  %v3165 = vpop.f32.mrf.mxu0
  %v3166 = vadd.f32 %v3103, %v3165
  %3167 = vmatmul.bf16.gmra.mxu0 %v1101
  %v3168 = vpop.f32.mrf.mxu0
  %v3169 = vadd.f32 %v3106, %v3168
  %v3170 = vpop.f32.mrf.mxu0
  %v3171 = vadd.f32 %v3108, %v3170
  %3172 = vmatmul.bf16.gmra.mxu0 %v1119
  %v3173 = vpop.f32.mrf.mxu0
  %v3174 = vadd.f32 %v3111, %v3173
  %v3175 = vpop.f32.mrf.mxu0
  %v3176 = vadd.f32 %v3113, %v3175
  %3177 = vmatmul.bf16.gmra.mxu0 %v1137
  %v3178 = vpop.f32.mrf.mxu0
  %v3179 = vadd.f32 %v3116, %v3178
  %v3180 = vpop.f32.mrf.mxu0
  %v3181 = vadd.f32 %v3118, %v3180
  %3182 = vmatmul.bf16.gmra.mxu0 %v1155
  %v3183 = vpop.f32.mrf.mxu0
  %v3184 = vadd.f32 %v3121, %v3183
  %v3185 = vpop.f32.mrf.mxu0
  %v3186 = vadd.f32 %v3123, %v3185
  %3187 = vmatmul.bf16.gmra.mxu0 %v1173
  %v3188 = vpop.f32.mrf.mxu0
  %v3189 = vadd.f32 %v3126, %v3188
  %v3190 = vpop.f32.mrf.mxu0
  %v3191 = vadd.f32 %v3128, %v3190
  %3192 = vmatmul.bf16.gmra.mxu0 %v1191
  %v3193 = vpop.f32.mrf.mxu0
  %v3194 = vadd.f32 %v3131, %v3193
  %v3195 = vpop.f32.mrf.mxu0
  %v3196 = vadd.f32 %v3133, %v3195
  %3197 = vmatmul.bf16.gmra.mxu0 %v1209
  %v3198 = vpop.f32.mrf.mxu0
  %v3199 = vadd.f32 %v3136, %v3198
  %v3200 = vpop.f32.mrf.mxu0
  %v3201 = vadd.f32 %v3138, %v3200
  %3202 = vmatmul.bf16.gmra.mxu0 %v1227
  %v3203 = vpop.f32.mrf.mxu0
  %v3204 = vadd.f32 %v3141, %v3203
  %v3205 = vpop.f32.mrf.mxu0
  %v3206 = vadd.f32 %v3143, %v3205
  %3207 = vmatmul.bf16.gmra.mxu0 %v1245
  %v3208 = vpop.f32.mrf.mxu0
  %v3209 = vadd.f32 %v3146, %v3208
  %v3210 = vpop.f32.mrf.mxu0
  %3211 = vdwg.mxu0
  %3212 = vmatpush.bf16.msra.mxu0 %v2415
  %3213 = vmatpush.bf16.msra.mxu0 %v2413
  %3214 = vmatpush.bf16.msra.mxu0 %v2411
  %3215 = vmatpush.bf16.msra.mxu0 %v2409
  %3216 = vmatpush.bf16.msra.mxu0 %v2407
  %3217 = vmatpush.bf16.msra.mxu0 %v2405
  %3218 = vmatpush.bf16.msra.mxu0 %v2403
  %3219 = vmatpush.bf16.msra.mxu0 %v2401
  %3220 = vmatmul.bf16.gmra.mxu0 %v1066
  %v3221 = vpop.f32.mrf.mxu0
  %v3222 = vadd.f32 %v3159, %v3221
  %v3223 = vpop.f32.mrf.mxu0
  %v3224 = vadd.f32 %v3161, %v3223
  %3225 = vmatmul.bf16.gmra.mxu0 %v1084
  %v3226 = vpop.f32.mrf.mxu0
  %v3227 = vadd.f32 %v3164, %v3226
  %v3228 = vpop.f32.mrf.mxu0
  %v3229 = vadd.f32 %v3166, %v3228
  %3230 = vmatmul.bf16.gmra.mxu0 %v1102
  %v3231 = vpop.f32.mrf.mxu0
  %v3232 = vadd.f32 %v3169, %v3231
  %v3233 = vpop.f32.mrf.mxu0
  %v3234 = vadd.f32 %v3171, %v3233
  %3235 = vmatmul.bf16.gmra.mxu0 %v1120
  %v3236 = vpop.f32.mrf.mxu0
  %v3237 = vadd.f32 %v3174, %v3236
  %v3238 = vpop.f32.mrf.mxu0
  %v3239 = vadd.f32 %v3176, %v3238
  %3240 = vmatmul.bf16.gmra.mxu0 %v1138
  %v3241 = vpop.f32.mrf.mxu0
  %v3242 = vadd.f32 %v3179, %v3241
  %v3243 = vpop.f32.mrf.mxu0
  %v3244 = vadd.f32 %v3181, %v3243
  %3245 = vmatmul.bf16.gmra.mxu0 %v1156
  %v3246 = vpop.f32.mrf.mxu0
  %v3247 = vadd.f32 %v3184, %v3246
  %v3248 = vpop.f32.mrf.mxu0
  %v3249 = vadd.f32 %v3186, %v3248
  %3250 = vmatmul.bf16.gmra.mxu0 %v1174
  %v3251 = vpop.f32.mrf.mxu0
  %v3252 = vadd.f32 %v3189, %v3251
  %v3253 = vpop.f32.mrf.mxu0
  %v3254 = vadd.f32 %v3191, %v3253
  %3255 = vmatmul.bf16.gmra.mxu0 %v1192
  %v3256 = vpop.f32.mrf.mxu0
  %v3257 = vadd.f32 %v3194, %v3256
  %v3258 = vpop.f32.mrf.mxu0
  %v3259 = vadd.f32 %v3196, %v3258
  %3260 = vmatmul.bf16.gmra.mxu0 %v1210
  %v3261 = vpop.f32.mrf.mxu0
  %v3262 = vadd.f32 %v3199, %v3261
  %v3263 = vpop.f32.mrf.mxu0
  %v3264 = vadd.f32 %v3201, %v3263
  %3265 = vmatmul.bf16.gmra.mxu0 %v1228
  %v3266 = vpop.f32.mrf.mxu0
  %v3267 = vadd.f32 %v3204, %v3266
  %v3268 = vpop.f32.mrf.mxu0
  %v3269 = vadd.f32 %v3206, %v3268
  %3270 = vmatmul.bf16.gmra.mxu0 %v1246
  %v3271 = vpop.f32.mrf.mxu0
  %v3272 = vadd.f32 %v3209, %v3271
  %v3273 = vpop.f32.mrf.mxu0
  %3274 = vdwg.mxu0
  %3275 = vmatpush.bf16.msra.mxu0 %v2431
  %3276 = vmatpush.bf16.msra.mxu0 %v2429
  %3277 = vmatpush.bf16.msra.mxu0 %v2427
  %3278 = vmatpush.bf16.msra.mxu0 %v2425
  %3279 = vmatpush.bf16.msra.mxu0 %v2423
  %3280 = vmatpush.bf16.msra.mxu0 %v2421
  %3281 = vmatpush.bf16.msra.mxu0 %v2419
  %3282 = vmatpush.bf16.msra.mxu0 %v2417
  %3283 = vmatmul.bf16.gmra.mxu0 %v1067
  %v3284 = vpop.f32.mrf.mxu0
  %v3285 = vadd.f32 %v3222, %v3284
  %v3286 = vpop.f32.mrf.mxu0
  %v3287 = vadd.f32 %v3224, %v3286
  %3288 = vmatmul.bf16.gmra.mxu0 %v1085
  %v3289 = vpop.f32.mrf.mxu0
  %v3290 = vadd.f32 %v3227, %v3289
  %v3291 = vpop.f32.mrf.mxu0
  %v3292 = vadd.f32 %v3229, %v3291
  %3293 = vmatmul.bf16.gmra.mxu0 %v1103
  %v3294 = vpop.f32.mrf.mxu0
  %v3295 = vadd.f32 %v3232, %v3294
  %v3296 = vpop.f32.mrf.mxu0
  %v3297 = vadd.f32 %v3234, %v3296
  %3298 = vmatmul.bf16.gmra.mxu0 %v1121
  %v3299 = vpop.f32.mrf.mxu0
  %v3300 = vadd.f32 %v3237, %v3299
  %v3301 = vpop.f32.mrf.mxu0
  %v3302 = vadd.f32 %v3239, %v3301
  %3303 = vmatmul.bf16.gmra.mxu0 %v1139
  %v3304 = vpop.f32.mrf.mxu0
  %v3305 = vadd.f32 %v3242, %v3304
  %v3306 = vpop.f32.mrf.mxu0
  %v3307 = vadd.f32 %v3244, %v3306
  %3308 = vmatmul.bf16.gmra.mxu0 %v1157
  %v3309 = vpop.f32.mrf.mxu0
  %v3310 = vadd.f32 %v3247, %v3309
  %v3311 = vpop.f32.mrf.mxu0
  %v3312 = vadd.f32 %v3249, %v3311
  %3313 = vmatmul.bf16.gmra.mxu0 %v1175
  %v3314 = vpop.f32.mrf.mxu0
  %v3315 = vadd.f32 %v3252, %v3314
  %v3316 = vpop.f32.mrf.mxu0
  %v3317 = vadd.f32 %v3254, %v3316
  %3318 = vmatmul.bf16.gmra.mxu0 %v1193
  %v3319 = vpop.f32.mrf.mxu0
  %v3320 = vadd.f32 %v3257, %v3319
  %v3321 = vpop.f32.mrf.mxu0
  %v3322 = vadd.f32 %v3259, %v3321
  %3323 = vmatmul.bf16.gmra.mxu0 %v1211
  %v3324 = vpop.f32.mrf.mxu0
  %v3325 = vadd.f32 %v3262, %v3324
  %v3326 = vpop.f32.mrf.mxu0
  %v3327 = vadd.f32 %v3264, %v3326
  %3328 = vmatmul.bf16.gmra.mxu0 %v1229
  %v3329 = vpop.f32.mrf.mxu0
  %v3330 = vadd.f32 %v3267, %v3329
  %v3331 = vpop.f32.mrf.mxu0
  %v3332 = vadd.f32 %v3269, %v3331
  %3333 = vmatmul.bf16.gmra.mxu0 %v1247
  %v3334 = vpop.f32.mrf.mxu0
  %v3335 = vadd.f32 %v3272, %v3334
  %v3336 = vpop.f32.mrf.mxu0
  %3337 = vdwg.mxu0
  %3338 = vmatpush.bf16.msra.mxu0 %v2447
  %3339 = vmatpush.bf16.msra.mxu0 %v2445
  %3340 = vmatpush.bf16.msra.mxu0 %v2443
  %3341 = vmatpush.bf16.msra.mxu0 %v2441
  %3342 = vmatpush.bf16.msra.mxu0 %v2439
  %3343 = vmatpush.bf16.msra.mxu0 %v2437
  %3344 = vmatpush.bf16.msra.mxu0 %v2435
  %3345 = vmatpush.bf16.msra.mxu0 %v2433
  %3346 = vmatmul.bf16.gmra.mxu0 %v1068
  %v3347 = vpop.f32.mrf.mxu0
  %v3348 = vadd.f32 %v3285, %v3347
  %v3349 = vpop.f32.mrf.mxu0
  %v3350 = vadd.f32 %v3287, %v3349
  %3351 = vmatmul.bf16.gmra.mxu0 %v1086
  %v3352 = vpop.f32.mrf.mxu0
  %v3353 = vadd.f32 %v3290, %v3352
  %v3354 = vpop.f32.mrf.mxu0
  %v3355 = vadd.f32 %v3292, %v3354
  %3356 = vmatmul.bf16.gmra.mxu0 %v1104
  %v3357 = vpop.f32.mrf.mxu0
  %v3358 = vadd.f32 %v3295, %v3357
  %v3359 = vpop.f32.mrf.mxu0
  %v3360 = vadd.f32 %v3297, %v3359
  %3361 = vmatmul.bf16.gmra.mxu0 %v1122
  %v3362 = vpop.f32.mrf.mxu0
  %v3363 = vadd.f32 %v3300, %v3362
  %v3364 = vpop.f32.mrf.mxu0
  %v3365 = vadd.f32 %v3302, %v3364
  %3366 = vmatmul.bf16.gmra.mxu0 %v1140
  %v3367 = vpop.f32.mrf.mxu0
  %v3368 = vadd.f32 %v3305, %v3367
  %v3369 = vpop.f32.mrf.mxu0
  %v3370 = vadd.f32 %v3307, %v3369
  %3371 = vmatmul.bf16.gmra.mxu0 %v1158
  %v3372 = vpop.f32.mrf.mxu0
  %v3373 = vadd.f32 %v3310, %v3372
  %v3374 = vpop.f32.mrf.mxu0
  %v3375 = vadd.f32 %v3312, %v3374
  %3376 = vmatmul.bf16.gmra.mxu0 %v1176
  %v3377 = vpop.f32.mrf.mxu0
  %v3378 = vadd.f32 %v3315, %v3377
  %v3379 = vpop.f32.mrf.mxu0
  %v3380 = vadd.f32 %v3317, %v3379
  %3381 = vmatmul.bf16.gmra.mxu0 %v1194
  %v3382 = vpop.f32.mrf.mxu0
  %v3383 = vadd.f32 %v3320, %v3382
  %v3384 = vpop.f32.mrf.mxu0
  %v3385 = vadd.f32 %v3322, %v3384
  %3386 = vmatmul.bf16.gmra.mxu0 %v1212
  %v3387 = vpop.f32.mrf.mxu0
  %v3388 = vadd.f32 %v3325, %v3387
  %v3389 = vpop.f32.mrf.mxu0
  %v3390 = vadd.f32 %v3327, %v3389
  %3391 = vmatmul.bf16.gmra.mxu0 %v1230
  %v3392 = vpop.f32.mrf.mxu0
  %v3393 = vadd.f32 %v3330, %v3392
  %v3394 = vpop.f32.mrf.mxu0
  %v3395 = vadd.f32 %v3332, %v3394
  %3396 = vmatmul.bf16.gmra.mxu0 %v1248
  %v3397 = vpop.f32.mrf.mxu0
  %v3398 = vadd.f32 %v3335, %v3397
  %v3399 = vpop.f32.mrf.mxu0
  %3400 = vdwg.mxu0
  %3401 = vmatpush.bf16.msra.mxu0 %v2463
  %3402 = vmatpush.bf16.msra.mxu0 %v2461
  %3403 = vmatpush.bf16.msra.mxu0 %v2459
  %3404 = vmatpush.bf16.msra.mxu0 %v2457
  %3405 = vmatpush.bf16.msra.mxu0 %v2455
  %3406 = vmatpush.bf16.msra.mxu0 %v2453
  %3407 = vmatpush.bf16.msra.mxu0 %v2451
  %3408 = vmatpush.bf16.msra.mxu0 %v2449
  %3409 = vmatmul.bf16.gmra.mxu0 %v1069
  %v3410 = vpop.f32.mrf.mxu0
  %v3411 = vadd.f32 %v3348, %v3410
  %v3412 = vpop.f32.mrf.mxu0
  %v3413 = vadd.f32 %v3350, %v3412
  %3414 = vmatmul.bf16.gmra.mxu0 %v1087
  %v3415 = vpop.f32.mrf.mxu0
  %v3416 = vadd.f32 %v3353, %v3415
  %v3417 = vpop.f32.mrf.mxu0
  %v3418 = vadd.f32 %v3355, %v3417
  %3419 = vmatmul.bf16.gmra.mxu0 %v1105
  %v3420 = vpop.f32.mrf.mxu0
  %v3421 = vadd.f32 %v3358, %v3420
  %v3422 = vpop.f32.mrf.mxu0
  %v3423 = vadd.f32 %v3360, %v3422
  %3424 = vmatmul.bf16.gmra.mxu0 %v1123
  %v3425 = vpop.f32.mrf.mxu0
  %v3426 = vadd.f32 %v3363, %v3425
  %v3427 = vpop.f32.mrf.mxu0
  %v3428 = vadd.f32 %v3365, %v3427
  %3429 = vmatmul.bf16.gmra.mxu0 %v1141
  %v3430 = vpop.f32.mrf.mxu0
  %v3431 = vadd.f32 %v3368, %v3430
  %v3432 = vpop.f32.mrf.mxu0
  %v3433 = vadd.f32 %v3370, %v3432
  %3434 = vmatmul.bf16.gmra.mxu0 %v1159
  %v3435 = vpop.f32.mrf.mxu0
  %v3436 = vadd.f32 %v3373, %v3435
  %v3437 = vpop.f32.mrf.mxu0
  %v3438 = vadd.f32 %v3375, %v3437
  %3439 = vmatmul.bf16.gmra.mxu0 %v1177
  %v3440 = vpop.f32.mrf.mxu0
  %v3441 = vadd.f32 %v3378, %v3440
  %v3442 = vpop.f32.mrf.mxu0
  %v3443 = vadd.f32 %v3380, %v3442
  %3444 = vmatmul.bf16.gmra.mxu0 %v1195
  %v3445 = vpop.f32.mrf.mxu0
  %v3446 = vadd.f32 %v3383, %v3445
  %v3447 = vpop.f32.mrf.mxu0
  %v3448 = vadd.f32 %v3385, %v3447
  %3449 = vmatmul.bf16.gmra.mxu0 %v1213
  %v3450 = vpop.f32.mrf.mxu0
  %v3451 = vadd.f32 %v3388, %v3450
  %v3452 = vpop.f32.mrf.mxu0
  %v3453 = vadd.f32 %v3390, %v3452
  %3454 = vmatmul.bf16.gmra.mxu0 %v1231
  %v3455 = vpop.f32.mrf.mxu0
  %v3456 = vadd.f32 %v3393, %v3455
  %v3457 = vpop.f32.mrf.mxu0
  %v3458 = vadd.f32 %v3395, %v3457
  %3459 = vmatmul.bf16.gmra.mxu0 %v1249
  %v3460 = vpop.f32.mrf.mxu0
  %v3461 = vadd.f32 %v3398, %v3460
  %v3462 = vpop.f32.mrf.mxu0
  %3463 = vdwg.mxu0
  %3464 = vmatpush.bf16.msra.mxu0 %v2479
  %3465 = vmatpush.bf16.msra.mxu0 %v2477
  %3466 = vmatpush.bf16.msra.mxu0 %v2475
  %3467 = vmatpush.bf16.msra.mxu0 %v2473
  %3468 = vmatpush.bf16.msra.mxu0 %v2471
  %3469 = vmatpush.bf16.msra.mxu0 %v2469
  %3470 = vmatpush.bf16.msra.mxu0 %v2467
  %3471 = vmatpush.bf16.msra.mxu0 %v2465
  %3472 = vmatmul.bf16.gmra.mxu0 %v1070
  %v3473 = vpop.f32.mrf.mxu0
  %v3474 = vadd.f32 %v3411, %v3473
  %v3475 = vpop.f32.mrf.mxu0
  %v3476 = vadd.f32 %v3413, %v3475
  %3477 = vmatmul.bf16.gmra.mxu0 %v1088
  %v3478 = vpop.f32.mrf.mxu0
  %v3479 = vadd.f32 %v3416, %v3478
  %v3480 = vpop.f32.mrf.mxu0
  %v3481 = vadd.f32 %v3418, %v3480
  %3482 = vmatmul.bf16.gmra.mxu0 %v1106
  %v3483 = vpop.f32.mrf.mxu0
  %v3484 = vadd.f32 %v3421, %v3483
  %v3485 = vpop.f32.mrf.mxu0
  %v3486 = vadd.f32 %v3423, %v3485
  %3487 = vmatmul.bf16.gmra.mxu0 %v1124
  %v3488 = vpop.f32.mrf.mxu0
  %v3489 = vadd.f32 %v3426, %v3488
  %v3490 = vpop.f32.mrf.mxu0
  %v3491 = vadd.f32 %v3428, %v3490
  %3492 = vmatmul.bf16.gmra.mxu0 %v1142
  %v3493 = vpop.f32.mrf.mxu0
  %v3494 = vadd.f32 %v3431, %v3493
  %v3495 = vpop.f32.mrf.mxu0
  %v3496 = vadd.f32 %v3433, %v3495
  %3497 = vmatmul.bf16.gmra.mxu0 %v1160
  %v3498 = vpop.f32.mrf.mxu0
  %v3499 = vadd.f32 %v3436, %v3498
  %v3500 = vpop.f32.mrf.mxu0
  %v3501 = vadd.f32 %v3438, %v3500
  %3502 = vmatmul.bf16.gmra.mxu0 %v1178
  %v3503 = vpop.f32.mrf.mxu0
  %v3504 = vadd.f32 %v3441, %v3503
  %v3505 = vpop.f32.mrf.mxu0
  %v3506 = vadd.f32 %v3443, %v3505
  %3507 = vmatmul.bf16.gmra.mxu0 %v1196
  %v3508 = vpop.f32.mrf.mxu0
  %v3509 = vadd.f32 %v3446, %v3508
  %v3510 = vpop.f32.mrf.mxu0
  %v3511 = vadd.f32 %v3448, %v3510
  %3512 = vmatmul.bf16.gmra.mxu0 %v1214
  %v3513 = vpop.f32.mrf.mxu0
  %v3514 = vadd.f32 %v3451, %v3513
  %v3515 = vpop.f32.mrf.mxu0
  %v3516 = vadd.f32 %v3453, %v3515
  %3517 = vmatmul.bf16.gmra.mxu0 %v1232
  %v3518 = vpop.f32.mrf.mxu0
  %v3519 = vadd.f32 %v3456, %v3518
  %v3520 = vpop.f32.mrf.mxu0
  %v3521 = vadd.f32 %v3458, %v3520
  %3522 = vmatmul.bf16.gmra.mxu0 %v1250
  %v3523 = vpop.f32.mrf.mxu0
  %v3524 = vadd.f32 %v3461, %v3523
  %v3525 = vpop.f32.mrf.mxu0
  %3526 = vdwg.mxu0
  %3527 = vmatpush.bf16.msra.mxu0 %v2495
  %3528 = vmatpush.bf16.msra.mxu0 %v2493
  %3529 = vmatpush.bf16.msra.mxu0 %v2491
  %3530 = vmatpush.bf16.msra.mxu0 %v2489
  %3531 = vmatpush.bf16.msra.mxu0 %v2487
  %3532 = vmatpush.bf16.msra.mxu0 %v2485
  %3533 = vmatpush.bf16.msra.mxu0 %v2483
  %3534 = vmatpush.bf16.msra.mxu0 %v2481
  %3535 = vmatmul.bf16.gmra.mxu0 %v1071
  %v3536 = vpop.f32.mrf.mxu0
  %v3537 = vadd.f32 %v3474, %v3536
  %v3538 = vpop.f32.mrf.mxu0
  %v3539 = vadd.f32 %v3476, %v3538
  %3540 = vmatmul.bf16.gmra.mxu0 %v1089
  %v3541 = vpop.f32.mrf.mxu0
  %v3542 = vadd.f32 %v3479, %v3541
  %v3543 = vpop.f32.mrf.mxu0
  %v3544 = vadd.f32 %v3481, %v3543
  %3545 = vmatmul.bf16.gmra.mxu0 %v1107
  %v3546 = vpop.f32.mrf.mxu0
  %v3547 = vadd.f32 %v3484, %v3546
  %v3548 = vpop.f32.mrf.mxu0
  %v3549 = vadd.f32 %v3486, %v3548
  %3550 = vmatmul.bf16.gmra.mxu0 %v1125
  %v3551 = vpop.f32.mrf.mxu0
  %v3552 = vadd.f32 %v3489, %v3551
  %v3553 = vpop.f32.mrf.mxu0
  %v3554 = vadd.f32 %v3491, %v3553
  %3555 = vmatmul.bf16.gmra.mxu0 %v1143
  %v3556 = vpop.f32.mrf.mxu0
  %v3557 = vadd.f32 %v3494, %v3556
  %v3558 = vpop.f32.mrf.mxu0
  %v3559 = vadd.f32 %v3496, %v3558
  %3560 = vmatmul.bf16.gmra.mxu0 %v1161
  %v3561 = vpop.f32.mrf.mxu0
  %v3562 = vadd.f32 %v3499, %v3561
  %v3563 = vpop.f32.mrf.mxu0
  %v3564 = vadd.f32 %v3501, %v3563
  %3565 = vmatmul.bf16.gmra.mxu0 %v1179
  %v3566 = vpop.f32.mrf.mxu0
  %v3567 = vadd.f32 %v3504, %v3566
  %v3568 = vpop.f32.mrf.mxu0
  %v3569 = vadd.f32 %v3506, %v3568
  %3570 = vmatmul.bf16.gmra.mxu0 %v1197
  %v3571 = vpop.f32.mrf.mxu0
  %v3572 = vadd.f32 %v3509, %v3571
  %v3573 = vpop.f32.mrf.mxu0
  %v3574 = vadd.f32 %v3511, %v3573
  %3575 = vmatmul.bf16.gmra.mxu0 %v1215
  %v3576 = vpop.f32.mrf.mxu0
  %v3577 = vadd.f32 %v3514, %v3576
  %v3578 = vpop.f32.mrf.mxu0
  %v3579 = vadd.f32 %v3516, %v3578
  %3580 = vmatmul.bf16.gmra.mxu0 %v1233
  %v3581 = vpop.f32.mrf.mxu0
  %v3582 = vadd.f32 %v3519, %v3581
  %v3583 = vpop.f32.mrf.mxu0
  %v3584 = vadd.f32 %v3521, %v3583
  %3585 = vmatmul.bf16.gmra.mxu0 %v1251
  %v3586 = vpop.f32.mrf.mxu0
  %v3587 = vadd.f32 %v3524, %v3586
  %v3588 = vpop.f32.mrf.mxu0
  %3589 = vdwg.mxu0
  %3590 = vmatpush.bf16.msra.mxu0 %v2511
  %3591 = vmatpush.bf16.msra.mxu0 %v2509
  %3592 = vmatpush.bf16.msra.mxu0 %v2507
  %3593 = vmatpush.bf16.msra.mxu0 %v2505
  %3594 = vmatpush.bf16.msra.mxu0 %v2503
  %3595 = vmatpush.bf16.msra.mxu0 %v2501
  %3596 = vmatpush.bf16.msra.mxu0 %v2499
  %3597 = vmatpush.bf16.msra.mxu0 %v2497
  %3598 = vmatmul.bf16.gmra.mxu0 %v1072
  %v3599 = vpop.f32.mrf.mxu0
  %v3600 = vadd.f32 %v3537, %v3599
  %v3601 = vpop.f32.mrf.mxu0
  %v3602 = vadd.f32 %v3539, %v3601
  %3603 = vmatmul.bf16.gmra.mxu0 %v1090
  %v3604 = vpop.f32.mrf.mxu0
  %v3605 = vadd.f32 %v3542, %v3604
  %v3606 = vpop.f32.mrf.mxu0
  %v3607 = vadd.f32 %v3544, %v3606
  %3608 = vmatmul.bf16.gmra.mxu0 %v1108
  %v3609 = vpop.f32.mrf.mxu0
  %v3610 = vadd.f32 %v3547, %v3609
  %v3611 = vpop.f32.mrf.mxu0
  %v3612 = vadd.f32 %v3549, %v3611
  %3613 = vmatmul.bf16.gmra.mxu0 %v1126
  %v3614 = vpop.f32.mrf.mxu0
  %v3615 = vadd.f32 %v3552, %v3614
  %v3616 = vpop.f32.mrf.mxu0
  %v3617 = vadd.f32 %v3554, %v3616
  %3618 = vmatmul.bf16.gmra.mxu0 %v1144
  %v3619 = vpop.f32.mrf.mxu0
  %v3620 = vadd.f32 %v3557, %v3619
  %v3621 = vpop.f32.mrf.mxu0
  %v3622 = vadd.f32 %v3559, %v3621
  %3623 = vmatmul.bf16.gmra.mxu0 %v1162
  %v3624 = vpop.f32.mrf.mxu0
  %v3625 = vadd.f32 %v3562, %v3624
  %v3626 = vpop.f32.mrf.mxu0
  %v3627 = vadd.f32 %v3564, %v3626
  %3628 = vmatmul.bf16.gmra.mxu0 %v1180
  %v3629 = vpop.f32.mrf.mxu0
  %v3630 = vadd.f32 %v3567, %v3629
  %v3631 = vpop.f32.mrf.mxu0
  %v3632 = vadd.f32 %v3569, %v3631
  %3633 = vmatmul.bf16.gmra.mxu0 %v1198
  %v3634 = vpop.f32.mrf.mxu0
  %v3635 = vadd.f32 %v3572, %v3634
  %v3636 = vpop.f32.mrf.mxu0
  %v3637 = vadd.f32 %v3574, %v3636
  %3638 = vmatmul.bf16.gmra.mxu0 %v1216
  %v3639 = vpop.f32.mrf.mxu0
  %v3640 = vadd.f32 %v3577, %v3639
  %v3641 = vpop.f32.mrf.mxu0
  %v3642 = vadd.f32 %v3579, %v3641
  %3643 = vmatmul.bf16.gmra.mxu0 %v1234
  %v3644 = vpop.f32.mrf.mxu0
  %v3645 = vadd.f32 %v3582, %v3644
  %v3646 = vpop.f32.mrf.mxu0
  %v3647 = vadd.f32 %v3584, %v3646
  %3648 = vmatmul.bf16.gmra.mxu0 %v1252
  %v3649 = vpop.f32.mrf.mxu0
  %v3650 = vadd.f32 %v3587, %v3649
  %v3651 = vpop.f32.mrf.mxu0
  %3652 = vdwg.mxu0
  %3653 = vmatpush.bf16.msra.mxu0 %v2527
  %3654 = vmatpush.bf16.msra.mxu0 %v2525
  %3655 = vmatpush.bf16.msra.mxu0 %v2523
  %3656 = vmatpush.bf16.msra.mxu0 %v2521
  %3657 = vmatpush.bf16.msra.mxu0 %v2519
  %3658 = vmatpush.bf16.msra.mxu0 %v2517
  %3659 = vmatpush.bf16.msra.mxu0 %v2515
  %3660 = vmatpush.bf16.msra.mxu0 %v2513
  %3661 = vmatmul.bf16.gmra.mxu0 %v1073
  %v3662 = vpop.f32.mrf.mxu0
  %v3663 = vadd.f32 %v3600, %v3662
  %v3664 = vpop.f32.mrf.mxu0
  %v3665 = vadd.f32 %v3602, %v3664
  %3666 = vmatmul.bf16.gmra.mxu0 %v1091
  %v3667 = vpop.f32.mrf.mxu0
  %v3668 = vadd.f32 %v3605, %v3667
  %v3669 = vpop.f32.mrf.mxu0
  %v3670 = vadd.f32 %v3607, %v3669
  %3671 = vmatmul.bf16.gmra.mxu0 %v1109
  %v3672 = vpop.f32.mrf.mxu0
  %v3673 = vadd.f32 %v3610, %v3672
  %v3674 = vpop.f32.mrf.mxu0
  %v3675 = vadd.f32 %v3612, %v3674
  %3676 = vmatmul.bf16.gmra.mxu0 %v1127
  %v3677 = vpop.f32.mrf.mxu0
  %v3678 = vadd.f32 %v3615, %v3677
  %v3679 = vpop.f32.mrf.mxu0
  %v3680 = vadd.f32 %v3617, %v3679
  %3681 = vmatmul.bf16.gmra.mxu0 %v1145
  %v3682 = vpop.f32.mrf.mxu0
  %v3683 = vadd.f32 %v3620, %v3682
  %v3684 = vpop.f32.mrf.mxu0
  %v3685 = vadd.f32 %v3622, %v3684
  %3686 = vmatmul.bf16.gmra.mxu0 %v1163
  %v3687 = vpop.f32.mrf.mxu0
  %v3688 = vadd.f32 %v3625, %v3687
  %v3689 = vpop.f32.mrf.mxu0
  %v3690 = vadd.f32 %v3627, %v3689
  %3691 = vmatmul.bf16.gmra.mxu0 %v1181
  %v3692 = vpop.f32.mrf.mxu0
  %v3693 = vadd.f32 %v3630, %v3692
  %v3694 = vpop.f32.mrf.mxu0
  %v3695 = vadd.f32 %v3632, %v3694
  %3696 = vmatmul.bf16.gmra.mxu0 %v1199
  %v3697 = vpop.f32.mrf.mxu0
  %v3698 = vadd.f32 %v3635, %v3697
  %v3699 = vpop.f32.mrf.mxu0
  %v3700 = vadd.f32 %v3637, %v3699
  %3701 = vmatmul.bf16.gmra.mxu0 %v1217
  %v3702 = vpop.f32.mrf.mxu0
  %v3703 = vadd.f32 %v3640, %v3702
  %v3704 = vpop.f32.mrf.mxu0
  %v3705 = vadd.f32 %v3642, %v3704
  %3706 = vmatmul.bf16.gmra.mxu0 %v1235
  %v3707 = vpop.f32.mrf.mxu0
  %v3708 = vadd.f32 %v3645, %v3707
  %v3709 = vpop.f32.mrf.mxu0
  %v3710 = vadd.f32 %v3647, %v3709
  %3711 = vmatmul.bf16.gmra.mxu0 %v1253
  %v3712 = vpop.f32.mrf.mxu0
  %v3713 = vadd.f32 %v3650, %v3712
  %v3714 = vpop.f32.mrf.mxu0
  %3715 = vdwg.mxu0
  %3716 = vmatpush.bf16.msra.mxu0 %v2543
  %3717 = vmatpush.bf16.msra.mxu0 %v2541
  %3718 = vmatpush.bf16.msra.mxu0 %v2539
  %3719 = vmatpush.bf16.msra.mxu0 %v2537
  %3720 = vmatpush.bf16.msra.mxu0 %v2535
  %3721 = vmatpush.bf16.msra.mxu0 %v2533
  %3722 = vmatpush.bf16.msra.mxu0 %v2531
  %3723 = vmatpush.bf16.msra.mxu0 %v2529
  %3724 = vmatmul.bf16.gmra.mxu0 %v1074
  %v3725 = vpop.f32.mrf.mxu0
  %v3726 = vadd.f32 %v3663, %v3725
  %v3727 = vpop.f32.mrf.mxu0
  %v3728 = vadd.f32 %v3665, %v3727
  %3729 = vmatmul.bf16.gmra.mxu0 %v1092
  %v3730 = vpop.f32.mrf.mxu0
  %v3731 = vadd.f32 %v3668, %v3730
  %v3732 = vpop.f32.mrf.mxu0
  %v3733 = vadd.f32 %v3670, %v3732
  %3734 = vmatmul.bf16.gmra.mxu0 %v1110
  %v3735 = vpop.f32.mrf.mxu0
  %v3736 = vadd.f32 %v3673, %v3735
  %v3737 = vpop.f32.mrf.mxu0
  %v3738 = vadd.f32 %v3675, %v3737
  %3739 = vmatmul.bf16.gmra.mxu0 %v1128
  %v3740 = vpop.f32.mrf.mxu0
  %v3741 = vadd.f32 %v3678, %v3740
  %v3742 = vpop.f32.mrf.mxu0
  %v3743 = vadd.f32 %v3680, %v3742
  %3744 = vmatmul.bf16.gmra.mxu0 %v1146
  %v3745 = vpop.f32.mrf.mxu0
  %v3746 = vadd.f32 %v3683, %v3745
  %v3747 = vpop.f32.mrf.mxu0
  %v3748 = vadd.f32 %v3685, %v3747
  %3749 = vmatmul.bf16.gmra.mxu0 %v1164
  %v3750 = vpop.f32.mrf.mxu0
  %v3751 = vadd.f32 %v3688, %v3750
  %v3752 = vpop.f32.mrf.mxu0
  %v3753 = vadd.f32 %v3690, %v3752
  %3754 = vmatmul.bf16.gmra.mxu0 %v1182
  %v3755 = vpop.f32.mrf.mxu0
  %v3756 = vadd.f32 %v3693, %v3755
  %v3757 = vpop.f32.mrf.mxu0
  %v3758 = vadd.f32 %v3695, %v3757
  %3759 = vmatmul.bf16.gmra.mxu0 %v1200
  %v3760 = vpop.f32.mrf.mxu0
  %v3761 = vadd.f32 %v3698, %v3760
  %v3762 = vpop.f32.mrf.mxu0
  %v3763 = vadd.f32 %v3700, %v3762
  %3764 = vmatmul.bf16.gmra.mxu0 %v1218
  %v3765 = vpop.f32.mrf.mxu0
  %v3766 = vadd.f32 %v3703, %v3765
  %v3767 = vpop.f32.mrf.mxu0
  %v3768 = vadd.f32 %v3705, %v3767
  %3769 = vmatmul.bf16.gmra.mxu0 %v1236
  %v3770 = vpop.f32.mrf.mxu0
  %v3771 = vadd.f32 %v3708, %v3770
  %v3772 = vpop.f32.mrf.mxu0
  %v3773 = vadd.f32 %v3710, %v3772
  %3774 = vmatmul.bf16.gmra.mxu0 %v1254
  %v3775 = vpop.f32.mrf.mxu0
  %v3776 = vadd.f32 %v3713, %v3775
  %v3777 = vpop.f32.mrf.mxu0
  %3778 = vdwg.mxu0
  %3779 = vmatpush.bf16.msra.mxu0 %v2559
  %3780 = vmatpush.bf16.msra.mxu0 %v2557
  %3781 = vmatpush.bf16.msra.mxu0 %v2555
  %3782 = vmatpush.bf16.msra.mxu0 %v2553
  %3783 = vmatpush.bf16.msra.mxu0 %v2551
  %3784 = vmatpush.bf16.msra.mxu0 %v2549
  %3785 = vmatpush.bf16.msra.mxu0 %v2547
  %3786 = vmatpush.bf16.msra.mxu0 %v2545
  %3787 = vmatmul.bf16.gmra.mxu0 %v1075
  %v3788 = vpop.f32.mrf.mxu0
  %v3789 = vadd.f32 %v3726, %v3788
  %v3790 = vpop.f32.mrf.mxu0
  %v3791 = vadd.f32 %v3728, %v3790
  %3792 = vmatmul.bf16.gmra.mxu0 %v1093
  %v3793 = vpop.f32.mrf.mxu0
  %v3794 = vadd.f32 %v3731, %v3793
  %v3795 = vpop.f32.mrf.mxu0
  %v3796 = vadd.f32 %v3733, %v3795
  %3797 = vmatmul.bf16.gmra.mxu0 %v1111
  %v3798 = vpop.f32.mrf.mxu0
  %v3799 = vadd.f32 %v3736, %v3798
  %v3800 = vpop.f32.mrf.mxu0
  %v3801 = vadd.f32 %v3738, %v3800
  %3802 = vmatmul.bf16.gmra.mxu0 %v1129
  %v3803 = vpop.f32.mrf.mxu0
  %v3804 = vadd.f32 %v3741, %v3803
  %v3805 = vpop.f32.mrf.mxu0
  %v3806 = vadd.f32 %v3743, %v3805
  %3807 = vmatmul.bf16.gmra.mxu0 %v1147
  %v3808 = vpop.f32.mrf.mxu0
  %v3809 = vadd.f32 %v3746, %v3808
  %v3810 = vpop.f32.mrf.mxu0
  %v3811 = vadd.f32 %v3748, %v3810
  %3812 = vmatmul.bf16.gmra.mxu0 %v1165
  %v3813 = vpop.f32.mrf.mxu0
  %v3814 = vadd.f32 %v3751, %v3813
  %v3815 = vpop.f32.mrf.mxu0
  %v3816 = vadd.f32 %v3753, %v3815
  %3817 = vmatmul.bf16.gmra.mxu0 %v1183
  %v3818 = vpop.f32.mrf.mxu0
  %v3819 = vadd.f32 %v3756, %v3818
  %v3820 = vpop.f32.mrf.mxu0
  %v3821 = vadd.f32 %v3758, %v3820
  %3822 = vmatmul.bf16.gmra.mxu0 %v1201
  %v3823 = vpop.f32.mrf.mxu0
  %v3824 = vadd.f32 %v3761, %v3823
  %v3825 = vpop.f32.mrf.mxu0
  %v3826 = vadd.f32 %v3763, %v3825
  %3827 = vmatmul.bf16.gmra.mxu0 %v1219
  %v3828 = vpop.f32.mrf.mxu0
  %v3829 = vadd.f32 %v3766, %v3828
  %v3830 = vpop.f32.mrf.mxu0
  %v3831 = vadd.f32 %v3768, %v3830
  %3832 = vmatmul.bf16.gmra.mxu0 %v1237
  %v3833 = vpop.f32.mrf.mxu0
  %v3834 = vadd.f32 %v3771, %v3833
  %v3835 = vpop.f32.mrf.mxu0
  %v3836 = vadd.f32 %v3773, %v3835
  %3837 = vmatmul.bf16.gmra.mxu0 %v1255
  %v3838 = vpop.f32.mrf.mxu0
  %v3839 = vadd.f32 %v3776, %v3838
  %v3840 = vpop.f32.mrf.mxu0
  %3841 = vdwg.mxu0
  %3842 = vmatpush.bf16.msra.mxu0 %v2575
  %3843 = vmatpush.bf16.msra.mxu0 %v2573
  %3844 = vmatpush.bf16.msra.mxu0 %v2571
  %3845 = vmatpush.bf16.msra.mxu0 %v2569
  %3846 = vmatpush.bf16.msra.mxu0 %v2567
  %3847 = vmatpush.bf16.msra.mxu0 %v2565
  %3848 = vmatpush.bf16.msra.mxu0 %v2563
  %3849 = vmatpush.bf16.msra.mxu0 %v2561
  %3850 = vmatmul.bf16.gmra.mxu0 %v1076
  %v3851 = vpop.f32.mrf.mxu0
  %v3852 = vadd.f32 %v3789, %v3851
  %v3853 = vpop.f32.mrf.mxu0
  %v3854 = vadd.f32 %v3791, %v3853
  %3855 = vmatmul.bf16.gmra.mxu0 %v1094
  %v3856 = vpop.f32.mrf.mxu0
  %v3857 = vadd.f32 %v3794, %v3856
  %v3858 = vpop.f32.mrf.mxu0
  %v3859 = vadd.f32 %v3796, %v3858
  %3860 = vmatmul.bf16.gmra.mxu0 %v1112
  %v3861 = vpop.f32.mrf.mxu0
  %v3862 = vadd.f32 %v3799, %v3861
  %v3863 = vpop.f32.mrf.mxu0
  %v3864 = vadd.f32 %v3801, %v3863
  %3865 = vmatmul.bf16.gmra.mxu0 %v1130
  %v3866 = vpop.f32.mrf.mxu0
  %v3867 = vadd.f32 %v3804, %v3866
  %v3868 = vpop.f32.mrf.mxu0
  %v3869 = vadd.f32 %v3806, %v3868
  %3870 = vmatmul.bf16.gmra.mxu0 %v1148
  %v3871 = vpop.f32.mrf.mxu0
  %v3872 = vadd.f32 %v3809, %v3871
  %v3873 = vpop.f32.mrf.mxu0
  %v3874 = vadd.f32 %v3811, %v3873
  %3875 = vmatmul.bf16.gmra.mxu0 %v1166
  %v3876 = vpop.f32.mrf.mxu0
  %v3877 = vadd.f32 %v3814, %v3876
  %v3878 = vpop.f32.mrf.mxu0
  %v3879 = vadd.f32 %v3816, %v3878
  %3880 = vmatmul.bf16.gmra.mxu0 %v1184
  %v3881 = vpop.f32.mrf.mxu0
  %v3882 = vadd.f32 %v3819, %v3881
  %v3883 = vpop.f32.mrf.mxu0
  %v3884 = vadd.f32 %v3821, %v3883
  %3885 = vmatmul.bf16.gmra.mxu0 %v1202
  %v3886 = vpop.f32.mrf.mxu0
  %v3887 = vadd.f32 %v3824, %v3886
  %v3888 = vpop.f32.mrf.mxu0
  %v3889 = vadd.f32 %v3826, %v3888
  %3890 = vmatmul.bf16.gmra.mxu0 %v1220
  %v3891 = vpop.f32.mrf.mxu0
  %v3892 = vadd.f32 %v3829, %v3891
  %v3893 = vpop.f32.mrf.mxu0
  %v3894 = vadd.f32 %v3831, %v3893
  %3895 = vmatmul.bf16.gmra.mxu0 %v1238
  %v3896 = vpop.f32.mrf.mxu0
  %v3897 = vadd.f32 %v3834, %v3896
  %v3898 = vpop.f32.mrf.mxu0
  %v3899 = vadd.f32 %v3836, %v3898
  %3900 = vmatmul.bf16.gmra.mxu0 %v1256
  %v3901 = vpop.f32.mrf.mxu0
  %v3902 = vadd.f32 %v3839, %v3901
  %v3903 = vpop.f32.mrf.mxu0
  %3904 = vdwg.mxu0
  %3905 = vmatpush.bf16.msra.mxu0 %v2591
  %3906 = vmatpush.bf16.msra.mxu0 %v2589
  %3907 = vmatpush.bf16.msra.mxu0 %v2587
  %3908 = vmatpush.bf16.msra.mxu0 %v2585
  %3909 = vmatpush.bf16.msra.mxu0 %v2583
  %3910 = vmatpush.bf16.msra.mxu0 %v2581
  %3911 = vmatpush.bf16.msra.mxu0 %v2579
  %3912 = vmatpush.bf16.msra.mxu0 %v2577
  %3913 = vmatmul.bf16.gmra.mxu0 %v1077
  %v3914 = vpop.f32.mrf.mxu0
  %v3915 = vadd.f32 %v3852, %v3914
  %v3916 = vpop.f32.mrf.mxu0
  %v3917 = vadd.f32 %v3854, %v3916
  %3918 = vmatmul.bf16.gmra.mxu0 %v1095
  %v3919 = vpop.f32.mrf.mxu0
  %v3920 = vadd.f32 %v3857, %v3919
  %v3921 = vpop.f32.mrf.mxu0
  %v3922 = vadd.f32 %v3859, %v3921
  %3923 = vmatmul.bf16.gmra.mxu0 %v1113
  %v3924 = vpop.f32.mrf.mxu0
  %v3925 = vadd.f32 %v3862, %v3924
  %v3926 = vpop.f32.mrf.mxu0
  %v3927 = vadd.f32 %v3864, %v3926
  %3928 = vmatmul.bf16.gmra.mxu0 %v1131
  %v3929 = vpop.f32.mrf.mxu0
  %v3930 = vadd.f32 %v3867, %v3929
  %v3931 = vpop.f32.mrf.mxu0
  %v3932 = vadd.f32 %v3869, %v3931
  %3933 = vmatmul.bf16.gmra.mxu0 %v1149
  %v3934 = vpop.f32.mrf.mxu0
  %v3935 = vadd.f32 %v3872, %v3934
  %v3936 = vpop.f32.mrf.mxu0
  %v3937 = vadd.f32 %v3874, %v3936
  %3938 = vmatmul.bf16.gmra.mxu0 %v1167
  %v3939 = vpop.f32.mrf.mxu0
  %v3940 = vadd.f32 %v3877, %v3939
  %v3941 = vpop.f32.mrf.mxu0
  %v3942 = vadd.f32 %v3879, %v3941
  %3943 = vmatmul.bf16.gmra.mxu0 %v1185
  %v3944 = vpop.f32.mrf.mxu0
  %v3945 = vadd.f32 %v3882, %v3944
  %v3946 = vpop.f32.mrf.mxu0
  %v3947 = vadd.f32 %v3884, %v3946
  %3948 = vmatmul.bf16.gmra.mxu0 %v1203
  %v3949 = vpop.f32.mrf.mxu0
  %v3950 = vadd.f32 %v3887, %v3949
  %v3951 = vpop.f32.mrf.mxu0
  %v3952 = vadd.f32 %v3889, %v3951
  %3953 = vmatmul.bf16.gmra.mxu0 %v1221
  %v3954 = vpop.f32.mrf.mxu0
  %v3955 = vadd.f32 %v3892, %v3954
  %v3956 = vpop.f32.mrf.mxu0
  %v3957 = vadd.f32 %v3894, %v3956
  %3958 = vmatmul.bf16.gmra.mxu0 %v1239
  %v3959 = vpop.f32.mrf.mxu0
  %v3960 = vadd.f32 %v3897, %v3959
  %v3961 = vpop.f32.mrf.mxu0
  %v3962 = vadd.f32 %v3899, %v3961
  %3963 = vmatmul.bf16.gmra.mxu0 %v1257
  %v3964 = vpop.f32.mrf.mxu0
  %v3965 = vadd.f32 %v3902, %v3964
  %v3966 = vpop.f32.mrf.mxu0
  %3967 = vdwg.mxu0
  %3968 = vmatpush.bf16.msra.mxu0 %v2607
  %3969 = vmatpush.bf16.msra.mxu0 %v2605
  %3970 = vmatpush.bf16.msra.mxu0 %v2603
  %3971 = vmatpush.bf16.msra.mxu0 %v2601
  %3972 = vmatpush.bf16.msra.mxu0 %v2599
  %3973 = vmatpush.bf16.msra.mxu0 %v2597
  %3974 = vmatpush.bf16.msra.mxu0 %v2595
  %3975 = vmatpush.bf16.msra.mxu0 %v2593
  %3976 = vmatmul.bf16.gmra.mxu0 %v1078
  %v3977 = vpop.f32.mrf.mxu0
  %v3978 = vadd.f32 %v3915, %v3977
  %v3979 = vpop.f32.mrf.mxu0
  %v3980 = vadd.f32 %v3917, %v3979
  %3981 = vmatmul.bf16.gmra.mxu0 %v1096
  %v3982 = vpop.f32.mrf.mxu0
  %v3983 = vadd.f32 %v3920, %v3982
  %v3984 = vpop.f32.mrf.mxu0
  %v3985 = vadd.f32 %v3922, %v3984
  %3986 = vmatmul.bf16.gmra.mxu0 %v1114
  %v3987 = vpop.f32.mrf.mxu0
  %v3988 = vadd.f32 %v3925, %v3987
  %v3989 = vpop.f32.mrf.mxu0
  %v3990 = vadd.f32 %v3927, %v3989
  %3991 = vmatmul.bf16.gmra.mxu0 %v1132
  %v3992 = vpop.f32.mrf.mxu0
  %v3993 = vadd.f32 %v3930, %v3992
  %v3994 = vpop.f32.mrf.mxu0
  %v3995 = vadd.f32 %v3932, %v3994
  %3996 = vmatmul.bf16.gmra.mxu0 %v1150
  %v3997 = vpop.f32.mrf.mxu0
  %v3998 = vadd.f32 %v3935, %v3997
  %v3999 = vpop.f32.mrf.mxu0
  %v4000 = vadd.f32 %v3937, %v3999
  %4001 = vmatmul.bf16.gmra.mxu0 %v1168
  %v4002 = vpop.f32.mrf.mxu0
  %v4003 = vadd.f32 %v3940, %v4002
  %v4004 = vpop.f32.mrf.mxu0
  %v4005 = vadd.f32 %v3942, %v4004
  %4006 = vmatmul.bf16.gmra.mxu0 %v1186
  %v4007 = vpop.f32.mrf.mxu0
  %v4008 = vadd.f32 %v3945, %v4007
  %v4009 = vpop.f32.mrf.mxu0
  %v4010 = vadd.f32 %v3947, %v4009
  %4011 = vmatmul.bf16.gmra.mxu0 %v1204
  %v4012 = vpop.f32.mrf.mxu0
  %v4013 = vadd.f32 %v3950, %v4012
  %v4014 = vpop.f32.mrf.mxu0
  %v4015 = vadd.f32 %v3952, %v4014
  %4016 = vmatmul.bf16.gmra.mxu0 %v1222
  %v4017 = vpop.f32.mrf.mxu0
  %v4018 = vadd.f32 %v3955, %v4017
  %v4019 = vpop.f32.mrf.mxu0
  %v4020 = vadd.f32 %v3957, %v4019
  %4021 = vmatmul.bf16.gmra.mxu0 %v1240
  %v4022 = vpop.f32.mrf.mxu0
  %v4023 = vadd.f32 %v3960, %v4022
  %v4024 = vpop.f32.mrf.mxu0
  %v4025 = vadd.f32 %v3962, %v4024
  %4026 = vmatmul.bf16.gmra.mxu0 %v1258
  %v4027 = vpop.f32.mrf.mxu0
  %v4028 = vadd.f32 %v3965, %v4027
  %v4029 = vpop.f32.mrf.mxu0
  %4030 = vdwg.mxu0
  %4031 = vmatpush.bf16.msra.mxu0 %v2336
  %4032 = vmatpush.bf16.msra.mxu0 %v2334
  %4033 = vmatpush.bf16.msra.mxu0 %v2332
  %4034 = vmatpush.bf16.msra.mxu0 %v2330
  %4035 = vmatpush.bf16.msra.mxu0 %v2328
  %4036 = vmatpush.bf16.msra.mxu0 %v2326
  %4037 = vmatpush.bf16.msra.mxu0 %v2324
  %4038 = vmatpush.bf16.msra.mxu0 %v2322
  %4039 = vmatmul.bf16.gmra.mxu0 %v1061
  %v4040 = vpop.f32.mrf.mxu0
  %v4041 = vadd.f32 0.0, %v4040
  %v4042 = vpop.f32.mrf.mxu0
  %v4043 = vadd.f32 0.0, %v4042
  %4044 = vmatmul.bf16.gmra.mxu0 %v1079
  %v4045 = vpop.f32.mrf.mxu0
  %v4046 = vadd.f32 0.0, %v4045
  %v4047 = vpop.f32.mrf.mxu0
  %v4048 = vadd.f32 0.0, %v4047
  %4049 = vmatmul.bf16.gmra.mxu0 %v1097
  %v4050 = vpop.f32.mrf.mxu0
  %v4051 = vadd.f32 0.0, %v4050
  %v4052 = vpop.f32.mrf.mxu0
  %v4053 = vadd.f32 0.0, %v4052
  %4054 = vmatmul.bf16.gmra.mxu0 %v1115
  %v4055 = vpop.f32.mrf.mxu0
  %v4056 = vadd.f32 0.0, %v4055
  %v4057 = vpop.f32.mrf.mxu0
  %v4058 = vadd.f32 0.0, %v4057
  %4059 = vmatmul.bf16.gmra.mxu0 %v1133
  %v4060 = vpop.f32.mrf.mxu0
  %v4061 = vadd.f32 0.0, %v4060
  %v4062 = vpop.f32.mrf.mxu0
  %v4063 = vadd.f32 0.0, %v4062
  %4064 = vmatmul.bf16.gmra.mxu0 %v1151
  %v4065 = vpop.f32.mrf.mxu0
  %v4066 = vadd.f32 0.0, %v4065
  %v4067 = vpop.f32.mrf.mxu0
  %v4068 = vadd.f32 0.0, %v4067
  %4069 = vmatmul.bf16.gmra.mxu0 %v1169
  %v4070 = vpop.f32.mrf.mxu0
  %v4071 = vadd.f32 0.0, %v4070
  %v4072 = vpop.f32.mrf.mxu0
  %v4073 = vadd.f32 0.0, %v4072
  %4074 = vmatmul.bf16.gmra.mxu0 %v1187
  %v4075 = vpop.f32.mrf.mxu0
  %v4076 = vadd.f32 0.0, %v4075
  %v4077 = vpop.f32.mrf.mxu0
  %v4078 = vadd.f32 0.0, %v4077
  %4079 = vmatmul.bf16.gmra.mxu0 %v1205
  %v4080 = vpop.f32.mrf.mxu0
  %v4081 = vadd.f32 0.0, %v4080
  %v4082 = vpop.f32.mrf.mxu0
  %v4083 = vadd.f32 0.0, %v4082
  %4084 = vmatmul.bf16.gmra.mxu0 %v1223
  %v4085 = vpop.f32.mrf.mxu0
  %v4086 = vadd.f32 0.0, %v4085
  %v4087 = vpop.f32.mrf.mxu0
  %v4088 = vadd.f32 0.0, %v4087
  %4089 = vmatmul.bf16.gmra.mxu0 %v1241
  %v4090 = vpop.f32.mrf.mxu0
  %v4091 = vadd.f32 0.0, %v4090
  %v4092 = vpop.f32.mrf.mxu0
  %4093 = vdwg.mxu0
  %4094 = vmatpush.bf16.msra.mxu0 %v2352
  %4095 = vmatpush.bf16.msra.mxu0 %v2350
  %4096 = vmatpush.bf16.msra.mxu0 %v2348
  %4097 = vmatpush.bf16.msra.mxu0 %v2346
  %4098 = vmatpush.bf16.msra.mxu0 %v2344
  %4099 = vmatpush.bf16.msra.mxu0 %v2342
  %4100 = vmatpush.bf16.msra.mxu0 %v2340
  %4101 = vmatpush.bf16.msra.mxu0 %v2338
  %4102 = vmatmul.bf16.gmra.mxu0 %v1062
  %v4103 = vpop.f32.mrf.mxu0
  %v4104 = vadd.f32 %v4041, %v4103
  %v4105 = vpop.f32.mrf.mxu0
  %v4106 = vadd.f32 %v4043, %v4105
  %4107 = vmatmul.bf16.gmra.mxu0 %v1080
  %v4108 = vpop.f32.mrf.mxu0
  %v4109 = vadd.f32 %v4046, %v4108
  %v4110 = vpop.f32.mrf.mxu0
  %v4111 = vadd.f32 %v4048, %v4110
  %4112 = vmatmul.bf16.gmra.mxu0 %v1098
  %v4113 = vpop.f32.mrf.mxu0
  %v4114 = vadd.f32 %v4051, %v4113
  %v4115 = vpop.f32.mrf.mxu0
  %v4116 = vadd.f32 %v4053, %v4115
  %4117 = vmatmul.bf16.gmra.mxu0 %v1116
  %v4118 = vpop.f32.mrf.mxu0
  %v4119 = vadd.f32 %v4056, %v4118
  %v4120 = vpop.f32.mrf.mxu0
  %v4121 = vadd.f32 %v4058, %v4120
  %4122 = vmatmul.bf16.gmra.mxu0 %v1134
  %v4123 = vpop.f32.mrf.mxu0
  %v4124 = vadd.f32 %v4061, %v4123
  %v4125 = vpop.f32.mrf.mxu0
  %v4126 = vadd.f32 %v4063, %v4125
  %4127 = vmatmul.bf16.gmra.mxu0 %v1152
  %v4128 = vpop.f32.mrf.mxu0
  %v4129 = vadd.f32 %v4066, %v4128
  %v4130 = vpop.f32.mrf.mxu0
  %v4131 = vadd.f32 %v4068, %v4130
  %4132 = vmatmul.bf16.gmra.mxu0 %v1170
  %v4133 = vpop.f32.mrf.mxu0
  %v4134 = vadd.f32 %v4071, %v4133
  %v4135 = vpop.f32.mrf.mxu0
  %v4136 = vadd.f32 %v4073, %v4135
  %4137 = vmatmul.bf16.gmra.mxu0 %v1188
  %v4138 = vpop.f32.mrf.mxu0
  %v4139 = vadd.f32 %v4076, %v4138
  %v4140 = vpop.f32.mrf.mxu0
  %v4141 = vadd.f32 %v4078, %v4140
  %4142 = vmatmul.bf16.gmra.mxu0 %v1206
  %v4143 = vpop.f32.mrf.mxu0
  %v4144 = vadd.f32 %v4081, %v4143
  %v4145 = vpop.f32.mrf.mxu0
  %v4146 = vadd.f32 %v4083, %v4145
  %4147 = vmatmul.bf16.gmra.mxu0 %v1224
  %v4148 = vpop.f32.mrf.mxu0
  %v4149 = vadd.f32 %v4086, %v4148
  %v4150 = vpop.f32.mrf.mxu0
  %v4151 = vadd.f32 %v4088, %v4150
  %4152 = vmatmul.bf16.gmra.mxu0 %v1242
  %v4153 = vpop.f32.mrf.mxu0
  %v4154 = vadd.f32 %v4091, %v4153
  %v4155 = vpop.f32.mrf.mxu0
  %4156 = vdwg.mxu0
  %4157 = vmatpush.bf16.msra.mxu0 %v2368
  %4158 = vmatpush.bf16.msra.mxu0 %v2366
  %4159 = vmatpush.bf16.msra.mxu0 %v2364
  %4160 = vmatpush.bf16.msra.mxu0 %v2362
  %4161 = vmatpush.bf16.msra.mxu0 %v2360
  %4162 = vmatpush.bf16.msra.mxu0 %v2358
  %4163 = vmatpush.bf16.msra.mxu0 %v2356
  %4164 = vmatpush.bf16.msra.mxu0 %v2354
  %4165 = vmatmul.bf16.gmra.mxu0 %v1063
  %v4166 = vpop.f32.mrf.mxu0
  %v4167 = vadd.f32 %v4104, %v4166
  %v4168 = vpop.f32.mrf.mxu0
  %v4169 = vadd.f32 %v4106, %v4168
  %4170 = vmatmul.bf16.gmra.mxu0 %v1081
  %v4171 = vpop.f32.mrf.mxu0
  %v4172 = vadd.f32 %v4109, %v4171
  %v4173 = vpop.f32.mrf.mxu0
  %v4174 = vadd.f32 %v4111, %v4173
  %4175 = vmatmul.bf16.gmra.mxu0 %v1099
  %v4176 = vpop.f32.mrf.mxu0
  %v4177 = vadd.f32 %v4114, %v4176
  %v4178 = vpop.f32.mrf.mxu0
  %v4179 = vadd.f32 %v4116, %v4178
  %4180 = vmatmul.bf16.gmra.mxu0 %v1117
  %v4181 = vpop.f32.mrf.mxu0
  %v4182 = vadd.f32 %v4119, %v4181
  %v4183 = vpop.f32.mrf.mxu0
  %v4184 = vadd.f32 %v4121, %v4183
  %4185 = vmatmul.bf16.gmra.mxu0 %v1135
  %v4186 = vpop.f32.mrf.mxu0
  %v4187 = vadd.f32 %v4124, %v4186
  %v4188 = vpop.f32.mrf.mxu0
  %v4189 = vadd.f32 %v4126, %v4188
  %4190 = vmatmul.bf16.gmra.mxu0 %v1153
  %v4191 = vpop.f32.mrf.mxu0
  %v4192 = vadd.f32 %v4129, %v4191
  %v4193 = vpop.f32.mrf.mxu0
  %v4194 = vadd.f32 %v4131, %v4193
  %4195 = vmatmul.bf16.gmra.mxu0 %v1171
  %v4196 = vpop.f32.mrf.mxu0
  %v4197 = vadd.f32 %v4134, %v4196
  %v4198 = vpop.f32.mrf.mxu0
  %v4199 = vadd.f32 %v4136, %v4198
  %4200 = vmatmul.bf16.gmra.mxu0 %v1189
  %v4201 = vpop.f32.mrf.mxu0
  %v4202 = vadd.f32 %v4139, %v4201
  %v4203 = vpop.f32.mrf.mxu0
  %v4204 = vadd.f32 %v4141, %v4203
  %4205 = vmatmul.bf16.gmra.mxu0 %v1207
  %v4206 = vpop.f32.mrf.mxu0
  %v4207 = vadd.f32 %v4144, %v4206
  %v4208 = vpop.f32.mrf.mxu0
  %v4209 = vadd.f32 %v4146, %v4208
  %4210 = vmatmul.bf16.gmra.mxu0 %v1225
  %v4211 = vpop.f32.mrf.mxu0
  %v4212 = vadd.f32 %v4149, %v4211
  %v4213 = vpop.f32.mrf.mxu0
  %v4214 = vadd.f32 %v4151, %v4213
  %4215 = vmatmul.bf16.gmra.mxu0 %v1243
  %v4216 = vpop.f32.mrf.mxu0
  %v4217 = vadd.f32 %v4154, %v4216
  %v4218 = vpop.f32.mrf.mxu0
  %4219 = vdwg.mxu0
  %4220 = vmatpush.bf16.msra.mxu0 %v2384
  %4221 = vmatpush.bf16.msra.mxu0 %v2382
  %4222 = vmatpush.bf16.msra.mxu0 %v2380
  %4223 = vmatpush.bf16.msra.mxu0 %v2378
  %4224 = vmatpush.bf16.msra.mxu0 %v2376
  %4225 = vmatpush.bf16.msra.mxu0 %v2374
  %4226 = vmatpush.bf16.msra.mxu0 %v2372
  %4227 = vmatpush.bf16.msra.mxu0 %v2370
  %4228 = vmatmul.bf16.gmra.mxu0 %v1064
  %v4229 = vpop.f32.mrf.mxu0
  %v4230 = vadd.f32 %v4167, %v4229
  %v4231 = vpop.f32.mrf.mxu0
  %v4232 = vadd.f32 %v4169, %v4231
  %4233 = vmatmul.bf16.gmra.mxu0 %v1082
  %v4234 = vpop.f32.mrf.mxu0
  %v4235 = vadd.f32 %v4172, %v4234
  %v4236 = vpop.f32.mrf.mxu0
  %v4237 = vadd.f32 %v4174, %v4236
  %4238 = vmatmul.bf16.gmra.mxu0 %v1100
  %v4239 = vpop.f32.mrf.mxu0
  %v4240 = vadd.f32 %v4177, %v4239
  %v4241 = vpop.f32.mrf.mxu0
  %v4242 = vadd.f32 %v4179, %v4241
  %4243 = vmatmul.bf16.gmra.mxu0 %v1118
  %v4244 = vpop.f32.mrf.mxu0
  %v4245 = vadd.f32 %v4182, %v4244
  %v4246 = vpop.f32.mrf.mxu0
  %v4247 = vadd.f32 %v4184, %v4246
  %4248 = vmatmul.bf16.gmra.mxu0 %v1136
  %v4249 = vpop.f32.mrf.mxu0
  %v4250 = vadd.f32 %v4187, %v4249
  %v4251 = vpop.f32.mrf.mxu0
  %v4252 = vadd.f32 %v4189, %v4251
  %4253 = vmatmul.bf16.gmra.mxu0 %v1154
  %v4254 = vpop.f32.mrf.mxu0
  %v4255 = vadd.f32 %v4192, %v4254
  %v4256 = vpop.f32.mrf.mxu0
  %v4257 = vadd.f32 %v4194, %v4256
  %4258 = vmatmul.bf16.gmra.mxu0 %v1172
  %v4259 = vpop.f32.mrf.mxu0
  %v4260 = vadd.f32 %v4197, %v4259
  %v4261 = vpop.f32.mrf.mxu0
  %v4262 = vadd.f32 %v4199, %v4261
  %4263 = vmatmul.bf16.gmra.mxu0 %v1190
  %v4264 = vpop.f32.mrf.mxu0
  %v4265 = vadd.f32 %v4202, %v4264
  %v4266 = vpop.f32.mrf.mxu0
  %v4267 = vadd.f32 %v4204, %v4266
  %4268 = vmatmul.bf16.gmra.mxu0 %v1208
  %v4269 = vpop.f32.mrf.mxu0
  %v4270 = vadd.f32 %v4207, %v4269
  %v4271 = vpop.f32.mrf.mxu0
  %v4272 = vadd.f32 %v4209, %v4271
  %4273 = vmatmul.bf16.gmra.mxu0 %v1226
  %v4274 = vpop.f32.mrf.mxu0
  %v4275 = vadd.f32 %v4212, %v4274
  %v4276 = vpop.f32.mrf.mxu0
  %v4277 = vadd.f32 %v4214, %v4276
  %4278 = vmatmul.bf16.gmra.mxu0 %v1244
  %v4279 = vpop.f32.mrf.mxu0
  %v4280 = vadd.f32 %v4217, %v4279
  %v4281 = vpop.f32.mrf.mxu0
  %4282 = vdwg.mxu0
  %4283 = vmatpush.bf16.msra.mxu0 %v2400
  %4284 = vmatpush.bf16.msra.mxu0 %v2398
  %4285 = vmatpush.bf16.msra.mxu0 %v2396
  %4286 = vmatpush.bf16.msra.mxu0 %v2394
  %4287 = vmatpush.bf16.msra.mxu0 %v2392
  %4288 = vmatpush.bf16.msra.mxu0 %v2390
  %4289 = vmatpush.bf16.msra.mxu0 %v2388
  %4290 = vmatpush.bf16.msra.mxu0 %v2386
  %4291 = vmatmul.bf16.gmra.mxu0 %v1065
  %v4292 = vpop.f32.mrf.mxu0
  %v4293 = vadd.f32 %v4230, %v4292
  %v4294 = vpop.f32.mrf.mxu0
  %v4295 = vadd.f32 %v4232, %v4294
  %4296 = vmatmul.bf16.gmra.mxu0 %v1083
  %v4297 = vpop.f32.mrf.mxu0
  %v4298 = vadd.f32 %v4235, %v4297
  %v4299 = vpop.f32.mrf.mxu0
  %v4300 = vadd.f32 %v4237, %v4299
  %4301 = vmatmul.bf16.gmra.mxu0 %v1101
  %v4302 = vpop.f32.mrf.mxu0
  %v4303 = vadd.f32 %v4240, %v4302
  %v4304 = vpop.f32.mrf.mxu0
  %v4305 = vadd.f32 %v4242, %v4304
  %4306 = vmatmul.bf16.gmra.mxu0 %v1119
  %v4307 = vpop.f32.mrf.mxu0
  %v4308 = vadd.f32 %v4245, %v4307
  %v4309 = vpop.f32.mrf.mxu0
  %v4310 = vadd.f32 %v4247, %v4309
  %4311 = vmatmul.bf16.gmra.mxu0 %v1137
  %v4312 = vpop.f32.mrf.mxu0
  %v4313 = vadd.f32 %v4250, %v4312
  %v4314 = vpop.f32.mrf.mxu0
  %v4315 = vadd.f32 %v4252, %v4314
  %4316 = vmatmul.bf16.gmra.mxu0 %v1155
  %v4317 = vpop.f32.mrf.mxu0
  %v4318 = vadd.f32 %v4255, %v4317
  %v4319 = vpop.f32.mrf.mxu0
  %v4320 = vadd.f32 %v4257, %v4319
  %4321 = vmatmul.bf16.gmra.mxu0 %v1173
  %v4322 = vpop.f32.mrf.mxu0
  %v4323 = vadd.f32 %v4260, %v4322
  %v4324 = vpop.f32.mrf.mxu0
  %v4325 = vadd.f32 %v4262, %v4324
  %4326 = vmatmul.bf16.gmra.mxu0 %v1191
  %v4327 = vpop.f32.mrf.mxu0
  %v4328 = vadd.f32 %v4265, %v4327
  %v4329 = vpop.f32.mrf.mxu0
  %v4330 = vadd.f32 %v4267, %v4329
  %4331 = vmatmul.bf16.gmra.mxu0 %v1209
  %v4332 = vpop.f32.mrf.mxu0
  %v4333 = vadd.f32 %v4270, %v4332
  %v4334 = vpop.f32.mrf.mxu0
  %v4335 = vadd.f32 %v4272, %v4334
  %4336 = vmatmul.bf16.gmra.mxu0 %v1227
  %v4337 = vpop.f32.mrf.mxu0
  %v4338 = vadd.f32 %v4275, %v4337
  %v4339 = vpop.f32.mrf.mxu0
  %v4340 = vadd.f32 %v4277, %v4339
  %4341 = vmatmul.bf16.gmra.mxu0 %v1245
  %v4342 = vpop.f32.mrf.mxu0
  %v4343 = vadd.f32 %v4280, %v4342
  %v4344 = vpop.f32.mrf.mxu0
  %4345 = vdwg.mxu0
  %4346 = vmatpush.bf16.msra.mxu0 %v2416
  %4347 = vmatpush.bf16.msra.mxu0 %v2414
  %4348 = vmatpush.bf16.msra.mxu0 %v2412
  %4349 = vmatpush.bf16.msra.mxu0 %v2410
  %4350 = vmatpush.bf16.msra.mxu0 %v2408
  %4351 = vmatpush.bf16.msra.mxu0 %v2406
  %4352 = vmatpush.bf16.msra.mxu0 %v2404
  %4353 = vmatpush.bf16.msra.mxu0 %v2402
  %4354 = vmatmul.bf16.gmra.mxu0 %v1066
  %v4355 = vpop.f32.mrf.mxu0
  %v4356 = vadd.f32 %v4293, %v4355
  %v4357 = vpop.f32.mrf.mxu0
  %v4358 = vadd.f32 %v4295, %v4357
  %4359 = vmatmul.bf16.gmra.mxu0 %v1084
  %v4360 = vpop.f32.mrf.mxu0
  %v4361 = vadd.f32 %v4298, %v4360
  %v4362 = vpop.f32.mrf.mxu0
  %v4363 = vadd.f32 %v4300, %v4362
  %4364 = vmatmul.bf16.gmra.mxu0 %v1102
  %v4365 = vpop.f32.mrf.mxu0
  %v4366 = vadd.f32 %v4303, %v4365
  %v4367 = vpop.f32.mrf.mxu0
  %v4368 = vadd.f32 %v4305, %v4367
  %4369 = vmatmul.bf16.gmra.mxu0 %v1120
  %v4370 = vpop.f32.mrf.mxu0
  %v4371 = vadd.f32 %v4308, %v4370
  %v4372 = vpop.f32.mrf.mxu0
  %v4373 = vadd.f32 %v4310, %v4372
  %4374 = vmatmul.bf16.gmra.mxu0 %v1138
  %v4375 = vpop.f32.mrf.mxu0
  %v4376 = vadd.f32 %v4313, %v4375
  %v4377 = vpop.f32.mrf.mxu0
  %v4378 = vadd.f32 %v4315, %v4377
  %4379 = vmatmul.bf16.gmra.mxu0 %v1156
  %v4380 = vpop.f32.mrf.mxu0
  %v4381 = vadd.f32 %v4318, %v4380
  %v4382 = vpop.f32.mrf.mxu0
  %v4383 = vadd.f32 %v4320, %v4382
  %4384 = vmatmul.bf16.gmra.mxu0 %v1174
  %v4385 = vpop.f32.mrf.mxu0
  %v4386 = vadd.f32 %v4323, %v4385
  %v4387 = vpop.f32.mrf.mxu0
  %v4388 = vadd.f32 %v4325, %v4387
  %4389 = vmatmul.bf16.gmra.mxu0 %v1192
  %v4390 = vpop.f32.mrf.mxu0
  %v4391 = vadd.f32 %v4328, %v4390
  %v4392 = vpop.f32.mrf.mxu0
  %v4393 = vadd.f32 %v4330, %v4392
  %4394 = vmatmul.bf16.gmra.mxu0 %v1210
  %v4395 = vpop.f32.mrf.mxu0
  %v4396 = vadd.f32 %v4333, %v4395
  %v4397 = vpop.f32.mrf.mxu0
  %v4398 = vadd.f32 %v4335, %v4397
  %4399 = vmatmul.bf16.gmra.mxu0 %v1228
  %v4400 = vpop.f32.mrf.mxu0
  %v4401 = vadd.f32 %v4338, %v4400
  %v4402 = vpop.f32.mrf.mxu0
  %v4403 = vadd.f32 %v4340, %v4402
  %4404 = vmatmul.bf16.gmra.mxu0 %v1246
  %v4405 = vpop.f32.mrf.mxu0
  %v4406 = vadd.f32 %v4343, %v4405
  %v4407 = vpop.f32.mrf.mxu0
  %4408 = vdwg.mxu0
  %4409 = vmatpush.bf16.msra.mxu0 %v2432
  %4410 = vmatpush.bf16.msra.mxu0 %v2430
  %4411 = vmatpush.bf16.msra.mxu0 %v2428
  %4412 = vmatpush.bf16.msra.mxu0 %v2426
  %4413 = vmatpush.bf16.msra.mxu0 %v2424
  %4414 = vmatpush.bf16.msra.mxu0 %v2422
  %4415 = vmatpush.bf16.msra.mxu0 %v2420
  %4416 = vmatpush.bf16.msra.mxu0 %v2418
  %4417 = vmatmul.bf16.gmra.mxu0 %v1067
  %v4418 = vpop.f32.mrf.mxu0
  %v4419 = vadd.f32 %v4356, %v4418
  %v4420 = vpop.f32.mrf.mxu0
  %v4421 = vadd.f32 %v4358, %v4420
  %4422 = vmatmul.bf16.gmra.mxu0 %v1085
  %v4423 = vpop.f32.mrf.mxu0
  %v4424 = vadd.f32 %v4361, %v4423
  %v4425 = vpop.f32.mrf.mxu0
  %v4426 = vadd.f32 %v4363, %v4425
  %4427 = vmatmul.bf16.gmra.mxu0 %v1103
  %v4428 = vpop.f32.mrf.mxu0
  %v4429 = vadd.f32 %v4366, %v4428
  %v4430 = vpop.f32.mrf.mxu0
  %v4431 = vadd.f32 %v4368, %v4430
  %4432 = vmatmul.bf16.gmra.mxu0 %v1121
  %v4433 = vpop.f32.mrf.mxu0
  %v4434 = vadd.f32 %v4371, %v4433
  %v4435 = vpop.f32.mrf.mxu0
  %v4436 = vadd.f32 %v4373, %v4435
  %4437 = vmatmul.bf16.gmra.mxu0 %v1139
  %v4438 = vpop.f32.mrf.mxu0
  %v4439 = vadd.f32 %v4376, %v4438
  %v4440 = vpop.f32.mrf.mxu0
  %v4441 = vadd.f32 %v4378, %v4440
  %4442 = vmatmul.bf16.gmra.mxu0 %v1157
  %v4443 = vpop.f32.mrf.mxu0
  %v4444 = vadd.f32 %v4381, %v4443
  %v4445 = vpop.f32.mrf.mxu0
  %v4446 = vadd.f32 %v4383, %v4445
  %4447 = vmatmul.bf16.gmra.mxu0 %v1175
  %v4448 = vpop.f32.mrf.mxu0
  %v4449 = vadd.f32 %v4386, %v4448
  %v4450 = vpop.f32.mrf.mxu0
  %v4451 = vadd.f32 %v4388, %v4450
  %4452 = vmatmul.bf16.gmra.mxu0 %v1193
  %v4453 = vpop.f32.mrf.mxu0
  %v4454 = vadd.f32 %v4391, %v4453
  %v4455 = vpop.f32.mrf.mxu0
  %v4456 = vadd.f32 %v4393, %v4455
  %4457 = vmatmul.bf16.gmra.mxu0 %v1211
  %v4458 = vpop.f32.mrf.mxu0
  %v4459 = vadd.f32 %v4396, %v4458
  %v4460 = vpop.f32.mrf.mxu0
  %v4461 = vadd.f32 %v4398, %v4460
  %4462 = vmatmul.bf16.gmra.mxu0 %v1229
  %v4463 = vpop.f32.mrf.mxu0
  %v4464 = vadd.f32 %v4401, %v4463
  %v4465 = vpop.f32.mrf.mxu0
  %v4466 = vadd.f32 %v4403, %v4465
  %4467 = vmatmul.bf16.gmra.mxu0 %v1247
  %v4468 = vpop.f32.mrf.mxu0
  %v4469 = vadd.f32 %v4406, %v4468
  %v4470 = vpop.f32.mrf.mxu0
  %4471 = vdwg.mxu0
  %4472 = vmatpush.bf16.msra.mxu0 %v2448
  %4473 = vmatpush.bf16.msra.mxu0 %v2446
  %4474 = vmatpush.bf16.msra.mxu0 %v2444
  %4475 = vmatpush.bf16.msra.mxu0 %v2442
  %4476 = vmatpush.bf16.msra.mxu0 %v2440
  %4477 = vmatpush.bf16.msra.mxu0 %v2438
  %4478 = vmatpush.bf16.msra.mxu0 %v2436
  %4479 = vmatpush.bf16.msra.mxu0 %v2434
  %4480 = vmatmul.bf16.gmra.mxu0 %v1068
  %v4481 = vpop.f32.mrf.mxu0
  %v4482 = vadd.f32 %v4419, %v4481
  %v4483 = vpop.f32.mrf.mxu0
  %v4484 = vadd.f32 %v4421, %v4483
  %4485 = vmatmul.bf16.gmra.mxu0 %v1086
  %v4486 = vpop.f32.mrf.mxu0
  %v4487 = vadd.f32 %v4424, %v4486
  %v4488 = vpop.f32.mrf.mxu0
  %v4489 = vadd.f32 %v4426, %v4488
  %4490 = vmatmul.bf16.gmra.mxu0 %v1104
  %v4491 = vpop.f32.mrf.mxu0
  %v4492 = vadd.f32 %v4429, %v4491
  %v4493 = vpop.f32.mrf.mxu0
  %v4494 = vadd.f32 %v4431, %v4493
  %4495 = vmatmul.bf16.gmra.mxu0 %v1122
  %v4496 = vpop.f32.mrf.mxu0
  %v4497 = vadd.f32 %v4434, %v4496
  %v4498 = vpop.f32.mrf.mxu0
  %v4499 = vadd.f32 %v4436, %v4498
  %4500 = vmatmul.bf16.gmra.mxu0 %v1140
  %v4501 = vpop.f32.mrf.mxu0
  %v4502 = vadd.f32 %v4439, %v4501
  %v4503 = vpop.f32.mrf.mxu0
  %v4504 = vadd.f32 %v4441, %v4503
  %4505 = vmatmul.bf16.gmra.mxu0 %v1158
  %v4506 = vpop.f32.mrf.mxu0
  %v4507 = vadd.f32 %v4444, %v4506
  %v4508 = vpop.f32.mrf.mxu0
  %v4509 = vadd.f32 %v4446, %v4508
  %4510 = vmatmul.bf16.gmra.mxu0 %v1176
  %v4511 = vpop.f32.mrf.mxu0
  %v4512 = vadd.f32 %v4449, %v4511
  %v4513 = vpop.f32.mrf.mxu0
  %v4514 = vadd.f32 %v4451, %v4513
  %4515 = vmatmul.bf16.gmra.mxu0 %v1194
  %v4516 = vpop.f32.mrf.mxu0
  %v4517 = vadd.f32 %v4454, %v4516
  %v4518 = vpop.f32.mrf.mxu0
  %v4519 = vadd.f32 %v4456, %v4518
  %4520 = vmatmul.bf16.gmra.mxu0 %v1212
  %v4521 = vpop.f32.mrf.mxu0
  %v4522 = vadd.f32 %v4459, %v4521
  %v4523 = vpop.f32.mrf.mxu0
  %v4524 = vadd.f32 %v4461, %v4523
  %4525 = vmatmul.bf16.gmra.mxu0 %v1230
  %v4526 = vpop.f32.mrf.mxu0
  %v4527 = vadd.f32 %v4464, %v4526
  %v4528 = vpop.f32.mrf.mxu0
  %v4529 = vadd.f32 %v4466, %v4528
  %4530 = vmatmul.bf16.gmra.mxu0 %v1248
  %v4531 = vpop.f32.mrf.mxu0
  %v4532 = vadd.f32 %v4469, %v4531
  %v4533 = vpop.f32.mrf.mxu0
  %4534 = vdwg.mxu0
  %4535 = vmatpush.bf16.msra.mxu0 %v2464
  %4536 = vmatpush.bf16.msra.mxu0 %v2462
  %4537 = vmatpush.bf16.msra.mxu0 %v2460
  %4538 = vmatpush.bf16.msra.mxu0 %v2458
  %4539 = vmatpush.bf16.msra.mxu0 %v2456
  %4540 = vmatpush.bf16.msra.mxu0 %v2454
  %4541 = vmatpush.bf16.msra.mxu0 %v2452
  %4542 = vmatpush.bf16.msra.mxu0 %v2450
  %4543 = vmatmul.bf16.gmra.mxu0 %v1069
  %v4544 = vpop.f32.mrf.mxu0
  %v4545 = vadd.f32 %v4482, %v4544
  %v4546 = vpop.f32.mrf.mxu0
  %v4547 = vadd.f32 %v4484, %v4546
  %4548 = vmatmul.bf16.gmra.mxu0 %v1087
  %v4549 = vpop.f32.mrf.mxu0
  %v4550 = vadd.f32 %v4487, %v4549
  %v4551 = vpop.f32.mrf.mxu0
  %v4552 = vadd.f32 %v4489, %v4551
  %4553 = vmatmul.bf16.gmra.mxu0 %v1105
  %v4554 = vpop.f32.mrf.mxu0
  %v4555 = vadd.f32 %v4492, %v4554
  %v4556 = vpop.f32.mrf.mxu0
  %v4557 = vadd.f32 %v4494, %v4556
  %4558 = vmatmul.bf16.gmra.mxu0 %v1123
  %v4559 = vpop.f32.mrf.mxu0
  %v4560 = vadd.f32 %v4497, %v4559
  %v4561 = vpop.f32.mrf.mxu0
  %v4562 = vadd.f32 %v4499, %v4561
  %4563 = vmatmul.bf16.gmra.mxu0 %v1141
  %v4564 = vpop.f32.mrf.mxu0
  %v4565 = vadd.f32 %v4502, %v4564
  %v4566 = vpop.f32.mrf.mxu0
  %v4567 = vadd.f32 %v4504, %v4566
  %4568 = vmatmul.bf16.gmra.mxu0 %v1159
  %v4569 = vpop.f32.mrf.mxu0
  %v4570 = vadd.f32 %v4507, %v4569
  %v4571 = vpop.f32.mrf.mxu0
  %v4572 = vadd.f32 %v4509, %v4571
  %4573 = vmatmul.bf16.gmra.mxu0 %v1177
  %v4574 = vpop.f32.mrf.mxu0
  %v4575 = vadd.f32 %v4512, %v4574
  %v4576 = vpop.f32.mrf.mxu0
  %v4577 = vadd.f32 %v4514, %v4576
  %4578 = vmatmul.bf16.gmra.mxu0 %v1195
  %v4579 = vpop.f32.mrf.mxu0
  %v4580 = vadd.f32 %v4517, %v4579
  %v4581 = vpop.f32.mrf.mxu0
  %v4582 = vadd.f32 %v4519, %v4581
  %4583 = vmatmul.bf16.gmra.mxu0 %v1213
  %v4584 = vpop.f32.mrf.mxu0
  %v4585 = vadd.f32 %v4522, %v4584
  %v4586 = vpop.f32.mrf.mxu0
  %v4587 = vadd.f32 %v4524, %v4586
  %4588 = vmatmul.bf16.gmra.mxu0 %v1231
  %v4589 = vpop.f32.mrf.mxu0
  %v4590 = vadd.f32 %v4527, %v4589
  %v4591 = vpop.f32.mrf.mxu0
  %v4592 = vadd.f32 %v4529, %v4591
  %4593 = vmatmul.bf16.gmra.mxu0 %v1249
  %v4594 = vpop.f32.mrf.mxu0
  %v4595 = vadd.f32 %v4532, %v4594
  %v4596 = vpop.f32.mrf.mxu0
  %4597 = vdwg.mxu0
  %4598 = vmatpush.bf16.msra.mxu0 %v2480
  %4599 = vmatpush.bf16.msra.mxu0 %v2478
  %4600 = vmatpush.bf16.msra.mxu0 %v2476
  %4601 = vmatpush.bf16.msra.mxu0 %v2474
  %4602 = vmatpush.bf16.msra.mxu0 %v2472
  %4603 = vmatpush.bf16.msra.mxu0 %v2470
  %4604 = vmatpush.bf16.msra.mxu0 %v2468
  %4605 = vmatpush.bf16.msra.mxu0 %v2466
  %4606 = vmatmul.bf16.gmra.mxu0 %v1070
  %v4607 = vpop.f32.mrf.mxu0
  %v4608 = vadd.f32 %v4545, %v4607
  %v4609 = vpop.f32.mrf.mxu0
  %v4610 = vadd.f32 %v4547, %v4609
  %4611 = vmatmul.bf16.gmra.mxu0 %v1088
  %v4612 = vpop.f32.mrf.mxu0
  %v4613 = vadd.f32 %v4550, %v4612
  %v4614 = vpop.f32.mrf.mxu0
  %v4615 = vadd.f32 %v4552, %v4614
  %4616 = vmatmul.bf16.gmra.mxu0 %v1106
  %v4617 = vpop.f32.mrf.mxu0
  %v4618 = vadd.f32 %v4555, %v4617
  %v4619 = vpop.f32.mrf.mxu0
  %v4620 = vadd.f32 %v4557, %v4619
  %4621 = vmatmul.bf16.gmra.mxu0 %v1124
  %v4622 = vpop.f32.mrf.mxu0
  %v4623 = vadd.f32 %v4560, %v4622
  %v4624 = vpop.f32.mrf.mxu0
  %v4625 = vadd.f32 %v4562, %v4624
  %4626 = vmatmul.bf16.gmra.mxu0 %v1142
  %v4627 = vpop.f32.mrf.mxu0
  %v4628 = vadd.f32 %v4565, %v4627
  %v4629 = vpop.f32.mrf.mxu0
  %v4630 = vadd.f32 %v4567, %v4629
  %4631 = vmatmul.bf16.gmra.mxu0 %v1160
  %v4632 = vpop.f32.mrf.mxu0
  %v4633 = vadd.f32 %v4570, %v4632
  %v4634 = vpop.f32.mrf.mxu0
  %v4635 = vadd.f32 %v4572, %v4634
  %4636 = vmatmul.bf16.gmra.mxu0 %v1178
  %v4637 = vpop.f32.mrf.mxu0
  %v4638 = vadd.f32 %v4575, %v4637
  %v4639 = vpop.f32.mrf.mxu0
  %v4640 = vadd.f32 %v4577, %v4639
  %4641 = vmatmul.bf16.gmra.mxu0 %v1196
  %v4642 = vpop.f32.mrf.mxu0
  %v4643 = vadd.f32 %v4580, %v4642
  %v4644 = vpop.f32.mrf.mxu0
  %v4645 = vadd.f32 %v4582, %v4644
  %4646 = vmatmul.bf16.gmra.mxu0 %v1214
  %v4647 = vpop.f32.mrf.mxu0
  %v4648 = vadd.f32 %v4585, %v4647
  %v4649 = vpop.f32.mrf.mxu0
  %v4650 = vadd.f32 %v4587, %v4649
  %4651 = vmatmul.bf16.gmra.mxu0 %v1232
  %v4652 = vpop.f32.mrf.mxu0
  %v4653 = vadd.f32 %v4590, %v4652
  %v4654 = vpop.f32.mrf.mxu0
  %v4655 = vadd.f32 %v4592, %v4654
  %4656 = vmatmul.bf16.gmra.mxu0 %v1250
  %v4657 = vpop.f32.mrf.mxu0
  %v4658 = vadd.f32 %v4595, %v4657
  %v4659 = vpop.f32.mrf.mxu0
  %4660 = vdwg.mxu0
  %4661 = vmatpush.bf16.msra.mxu0 %v2496
  %4662 = vmatpush.bf16.msra.mxu0 %v2494
  %4663 = vmatpush.bf16.msra.mxu0 %v2492
  %4664 = vmatpush.bf16.msra.mxu0 %v2490
  %4665 = vmatpush.bf16.msra.mxu0 %v2488
  %4666 = vmatpush.bf16.msra.mxu0 %v2486
  %4667 = vmatpush.bf16.msra.mxu0 %v2484
  %4668 = vmatpush.bf16.msra.mxu0 %v2482
  %4669 = vmatmul.bf16.gmra.mxu0 %v1071
  %v4670 = vpop.f32.mrf.mxu0
  %v4671 = vadd.f32 %v4608, %v4670
  %v4672 = vpop.f32.mrf.mxu0
  %v4673 = vadd.f32 %v4610, %v4672
  %4674 = vmatmul.bf16.gmra.mxu0 %v1089
  %v4675 = vpop.f32.mrf.mxu0
  %v4676 = vadd.f32 %v4613, %v4675
  %v4677 = vpop.f32.mrf.mxu0
  %v4678 = vadd.f32 %v4615, %v4677
  %4679 = vmatmul.bf16.gmra.mxu0 %v1107
  %v4680 = vpop.f32.mrf.mxu0
  %v4681 = vadd.f32 %v4618, %v4680
  %v4682 = vpop.f32.mrf.mxu0
  %v4683 = vadd.f32 %v4620, %v4682
  %4684 = vmatmul.bf16.gmra.mxu0 %v1125
  %v4685 = vpop.f32.mrf.mxu0
  %v4686 = vadd.f32 %v4623, %v4685
  %v4687 = vpop.f32.mrf.mxu0
  %v4688 = vadd.f32 %v4625, %v4687
  %4689 = vmatmul.bf16.gmra.mxu0 %v1143
  %v4690 = vpop.f32.mrf.mxu0
  %v4691 = vadd.f32 %v4628, %v4690
  %v4692 = vpop.f32.mrf.mxu0
  %v4693 = vadd.f32 %v4630, %v4692
  %4694 = vmatmul.bf16.gmra.mxu0 %v1161
  %v4695 = vpop.f32.mrf.mxu0
  %v4696 = vadd.f32 %v4633, %v4695
  %v4697 = vpop.f32.mrf.mxu0
  %v4698 = vadd.f32 %v4635, %v4697
  %4699 = vmatmul.bf16.gmra.mxu0 %v1179
  %v4700 = vpop.f32.mrf.mxu0
  %v4701 = vadd.f32 %v4638, %v4700
  %v4702 = vpop.f32.mrf.mxu0
  %v4703 = vadd.f32 %v4640, %v4702
  %4704 = vmatmul.bf16.gmra.mxu0 %v1197
  %v4705 = vpop.f32.mrf.mxu0
  %v4706 = vadd.f32 %v4643, %v4705
  %v4707 = vpop.f32.mrf.mxu0
  %v4708 = vadd.f32 %v4645, %v4707
  %4709 = vmatmul.bf16.gmra.mxu0 %v1215
  %v4710 = vpop.f32.mrf.mxu0
  %v4711 = vadd.f32 %v4648, %v4710
  %v4712 = vpop.f32.mrf.mxu0
  %v4713 = vadd.f32 %v4650, %v4712
  %4714 = vmatmul.bf16.gmra.mxu0 %v1233
  %v4715 = vpop.f32.mrf.mxu0
  %v4716 = vadd.f32 %v4653, %v4715
  %v4717 = vpop.f32.mrf.mxu0
  %v4718 = vadd.f32 %v4655, %v4717
  %4719 = vmatmul.bf16.gmra.mxu0 %v1251
  %v4720 = vpop.f32.mrf.mxu0
  %v4721 = vadd.f32 %v4658, %v4720
  %v4722 = vpop.f32.mrf.mxu0
  %4723 = vdwg.mxu0
  %4724 = vmatpush.bf16.msra.mxu0 %v2512
  %4725 = vmatpush.bf16.msra.mxu0 %v2510
  %4726 = vmatpush.bf16.msra.mxu0 %v2508
  %4727 = vmatpush.bf16.msra.mxu0 %v2506
  %4728 = vmatpush.bf16.msra.mxu0 %v2504
  %4729 = vmatpush.bf16.msra.mxu0 %v2502
  %4730 = vmatpush.bf16.msra.mxu0 %v2500
  %4731 = vmatpush.bf16.msra.mxu0 %v2498
  %4732 = vmatmul.bf16.gmra.mxu0 %v1072
  %v4733 = vpop.f32.mrf.mxu0
  %v4734 = vadd.f32 %v4671, %v4733
  %v4735 = vpop.f32.mrf.mxu0
  %v4736 = vadd.f32 %v4673, %v4735
  %4737 = vmatmul.bf16.gmra.mxu0 %v1090
  %v4738 = vpop.f32.mrf.mxu0
  %v4739 = vadd.f32 %v4676, %v4738
  %v4740 = vpop.f32.mrf.mxu0
  %v4741 = vadd.f32 %v4678, %v4740
  %4742 = vmatmul.bf16.gmra.mxu0 %v1108
  %v4743 = vpop.f32.mrf.mxu0
  %v4744 = vadd.f32 %v4681, %v4743
  %v4745 = vpop.f32.mrf.mxu0
  %v4746 = vadd.f32 %v4683, %v4745
  %4747 = vmatmul.bf16.gmra.mxu0 %v1126
  %v4748 = vpop.f32.mrf.mxu0
  %v4749 = vadd.f32 %v4686, %v4748
  %v4750 = vpop.f32.mrf.mxu0
  %v4751 = vadd.f32 %v4688, %v4750
  %4752 = vmatmul.bf16.gmra.mxu0 %v1144
  %v4753 = vpop.f32.mrf.mxu0
  %v4754 = vadd.f32 %v4691, %v4753
  %v4755 = vpop.f32.mrf.mxu0
  %v4756 = vadd.f32 %v4693, %v4755
  %4757 = vmatmul.bf16.gmra.mxu0 %v1162
  %v4758 = vpop.f32.mrf.mxu0
  %v4759 = vadd.f32 %v4696, %v4758
  %v4760 = vpop.f32.mrf.mxu0
  %v4761 = vadd.f32 %v4698, %v4760
  %4762 = vmatmul.bf16.gmra.mxu0 %v1180
  %v4763 = vpop.f32.mrf.mxu0
  %v4764 = vadd.f32 %v4701, %v4763
  %v4765 = vpop.f32.mrf.mxu0
  %v4766 = vadd.f32 %v4703, %v4765
  %4767 = vmatmul.bf16.gmra.mxu0 %v1198
  %v4768 = vpop.f32.mrf.mxu0
  %v4769 = vadd.f32 %v4706, %v4768
  %v4770 = vpop.f32.mrf.mxu0
  %v4771 = vadd.f32 %v4708, %v4770
  %4772 = vmatmul.bf16.gmra.mxu0 %v1216
  %v4773 = vpop.f32.mrf.mxu0
  %v4774 = vadd.f32 %v4711, %v4773
  %v4775 = vpop.f32.mrf.mxu0
  %v4776 = vadd.f32 %v4713, %v4775
  %4777 = vmatmul.bf16.gmra.mxu0 %v1234
  %v4778 = vpop.f32.mrf.mxu0
  %v4779 = vadd.f32 %v4716, %v4778
  %v4780 = vpop.f32.mrf.mxu0
  %v4781 = vadd.f32 %v4718, %v4780
  %4782 = vmatmul.bf16.gmra.mxu0 %v1252
  %v4783 = vpop.f32.mrf.mxu0
  %v4784 = vadd.f32 %v4721, %v4783
  %v4785 = vpop.f32.mrf.mxu0
  %4786 = vdwg.mxu0
  %4787 = vmatpush.bf16.msra.mxu0 %v2528
  %4788 = vmatpush.bf16.msra.mxu0 %v2526
  %4789 = vmatpush.bf16.msra.mxu0 %v2524
  %4790 = vmatpush.bf16.msra.mxu0 %v2522
  %4791 = vmatpush.bf16.msra.mxu0 %v2520
  %4792 = vmatpush.bf16.msra.mxu0 %v2518
  %4793 = vmatpush.bf16.msra.mxu0 %v2516
  %4794 = vmatpush.bf16.msra.mxu0 %v2514
  %4795 = vmatmul.bf16.gmra.mxu0 %v1073
  %v4796 = vpop.f32.mrf.mxu0
  %v4797 = vadd.f32 %v4734, %v4796
  %v4798 = vpop.f32.mrf.mxu0
  %v4799 = vadd.f32 %v4736, %v4798
  %4800 = vmatmul.bf16.gmra.mxu0 %v1091
  %v4801 = vpop.f32.mrf.mxu0
  %v4802 = vadd.f32 %v4739, %v4801
  %v4803 = vpop.f32.mrf.mxu0
  %v4804 = vadd.f32 %v4741, %v4803
  %4805 = vmatmul.bf16.gmra.mxu0 %v1109
  %v4806 = vpop.f32.mrf.mxu0
  %v4807 = vadd.f32 %v4744, %v4806
  %v4808 = vpop.f32.mrf.mxu0
  %v4809 = vadd.f32 %v4746, %v4808
  %4810 = vmatmul.bf16.gmra.mxu0 %v1127
  %v4811 = vpop.f32.mrf.mxu0
  %v4812 = vadd.f32 %v4749, %v4811
  %v4813 = vpop.f32.mrf.mxu0
  %v4814 = vadd.f32 %v4751, %v4813
  %4815 = vmatmul.bf16.gmra.mxu0 %v1145
  %v4816 = vpop.f32.mrf.mxu0
  %v4817 = vadd.f32 %v4754, %v4816
  %v4818 = vpop.f32.mrf.mxu0
  %v4819 = vadd.f32 %v4756, %v4818
  %4820 = vmatmul.bf16.gmra.mxu0 %v1163
  %v4821 = vpop.f32.mrf.mxu0
  %v4822 = vadd.f32 %v4759, %v4821
  %v4823 = vpop.f32.mrf.mxu0
  %v4824 = vadd.f32 %v4761, %v4823
  %4825 = vmatmul.bf16.gmra.mxu0 %v1181
  %v4826 = vpop.f32.mrf.mxu0
  %v4827 = vadd.f32 %v4764, %v4826
  %v4828 = vpop.f32.mrf.mxu0
  %v4829 = vadd.f32 %v4766, %v4828
  %4830 = vmatmul.bf16.gmra.mxu0 %v1199
  %v4831 = vpop.f32.mrf.mxu0
  %v4832 = vadd.f32 %v4769, %v4831
  %v4833 = vpop.f32.mrf.mxu0
  %v4834 = vadd.f32 %v4771, %v4833
  %4835 = vmatmul.bf16.gmra.mxu0 %v1217
  %v4836 = vpop.f32.mrf.mxu0
  %v4837 = vadd.f32 %v4774, %v4836
  %v4838 = vpop.f32.mrf.mxu0
  %v4839 = vadd.f32 %v4776, %v4838
  %4840 = vmatmul.bf16.gmra.mxu0 %v1235
  %v4841 = vpop.f32.mrf.mxu0
  %v4842 = vadd.f32 %v4779, %v4841
  %v4843 = vpop.f32.mrf.mxu0
  %v4844 = vadd.f32 %v4781, %v4843
  %4845 = vmatmul.bf16.gmra.mxu0 %v1253
  %v4846 = vpop.f32.mrf.mxu0
  %v4847 = vadd.f32 %v4784, %v4846
  %v4848 = vpop.f32.mrf.mxu0
  %4849 = vdwg.mxu0
  %4850 = vmatpush.bf16.msra.mxu0 %v2544
  %4851 = vmatpush.bf16.msra.mxu0 %v2542
  %4852 = vmatpush.bf16.msra.mxu0 %v2540
  %4853 = vmatpush.bf16.msra.mxu0 %v2538
  %4854 = vmatpush.bf16.msra.mxu0 %v2536
  %4855 = vmatpush.bf16.msra.mxu0 %v2534
  %4856 = vmatpush.bf16.msra.mxu0 %v2532
  %4857 = vmatpush.bf16.msra.mxu0 %v2530
  %4858 = vmatmul.bf16.gmra.mxu0 %v1074
  %v4859 = vpop.f32.mrf.mxu0
  %v4860 = vadd.f32 %v4797, %v4859
  %v4861 = vpop.f32.mrf.mxu0
  %v4862 = vadd.f32 %v4799, %v4861
  %4863 = vmatmul.bf16.gmra.mxu0 %v1092
  %v4864 = vpop.f32.mrf.mxu0
  %v4865 = vadd.f32 %v4802, %v4864
  %v4866 = vpop.f32.mrf.mxu0
  %v4867 = vadd.f32 %v4804, %v4866
  %4868 = vmatmul.bf16.gmra.mxu0 %v1110
  %v4869 = vpop.f32.mrf.mxu0
  %v4870 = vadd.f32 %v4807, %v4869
  %v4871 = vpop.f32.mrf.mxu0
  %v4872 = vadd.f32 %v4809, %v4871
  %4873 = vmatmul.bf16.gmra.mxu0 %v1128
  %v4874 = vpop.f32.mrf.mxu0
  %v4875 = vadd.f32 %v4812, %v4874
  %v4876 = vpop.f32.mrf.mxu0
  %v4877 = vadd.f32 %v4814, %v4876
  %4878 = vmatmul.bf16.gmra.mxu0 %v1146
  %v4879 = vpop.f32.mrf.mxu0
  %v4880 = vadd.f32 %v4817, %v4879
  %v4881 = vpop.f32.mrf.mxu0
  %v4882 = vadd.f32 %v4819, %v4881
  %4883 = vmatmul.bf16.gmra.mxu0 %v1164
  %v4884 = vpop.f32.mrf.mxu0
  %v4885 = vadd.f32 %v4822, %v4884
  %v4886 = vpop.f32.mrf.mxu0
  %v4887 = vadd.f32 %v4824, %v4886
  %4888 = vmatmul.bf16.gmra.mxu0 %v1182
  %v4889 = vpop.f32.mrf.mxu0
  %v4890 = vadd.f32 %v4827, %v4889
  %v4891 = vpop.f32.mrf.mxu0
  %v4892 = vadd.f32 %v4829, %v4891
  %4893 = vmatmul.bf16.gmra.mxu0 %v1200
  %v4894 = vpop.f32.mrf.mxu0
  %v4895 = vadd.f32 %v4832, %v4894
  %v4896 = vpop.f32.mrf.mxu0
  %v4897 = vadd.f32 %v4834, %v4896
  %4898 = vmatmul.bf16.gmra.mxu0 %v1218
  %v4899 = vpop.f32.mrf.mxu0
  %v4900 = vadd.f32 %v4837, %v4899
  %v4901 = vpop.f32.mrf.mxu0
  %v4902 = vadd.f32 %v4839, %v4901
  %4903 = vmatmul.bf16.gmra.mxu0 %v1236
  %v4904 = vpop.f32.mrf.mxu0
  %v4905 = vadd.f32 %v4842, %v4904
  %v4906 = vpop.f32.mrf.mxu0
  %v4907 = vadd.f32 %v4844, %v4906
  %4908 = vmatmul.bf16.gmra.mxu0 %v1254
  %v4909 = vpop.f32.mrf.mxu0
  %v4910 = vadd.f32 %v4847, %v4909
  %v4911 = vpop.f32.mrf.mxu0
  %4912 = vdwg.mxu0
  %4913 = vmatpush.bf16.msra.mxu0 %v2560
  %4914 = vmatpush.bf16.msra.mxu0 %v2558
  %4915 = vmatpush.bf16.msra.mxu0 %v2556
  %4916 = vmatpush.bf16.msra.mxu0 %v2554
  %4917 = vmatpush.bf16.msra.mxu0 %v2552
  %4918 = vmatpush.bf16.msra.mxu0 %v2550
  %4919 = vmatpush.bf16.msra.mxu0 %v2548
  %4920 = vmatpush.bf16.msra.mxu0 %v2546
  %4921 = vmatmul.bf16.gmra.mxu0 %v1075
  %v4922 = vpop.f32.mrf.mxu0
  %v4923 = vadd.f32 %v4860, %v4922
  %v4924 = vpop.f32.mrf.mxu0
  %v4925 = vadd.f32 %v4862, %v4924
  %4926 = vmatmul.bf16.gmra.mxu0 %v1093
  %v4927 = vpop.f32.mrf.mxu0
  %v4928 = vadd.f32 %v4865, %v4927
  %v4929 = vpop.f32.mrf.mxu0
  %v4930 = vadd.f32 %v4867, %v4929
  %4931 = vmatmul.bf16.gmra.mxu0 %v1111
  %v4932 = vpop.f32.mrf.mxu0
  %v4933 = vadd.f32 %v4870, %v4932
  %v4934 = vpop.f32.mrf.mxu0
  %v4935 = vadd.f32 %v4872, %v4934
  %4936 = vmatmul.bf16.gmra.mxu0 %v1129
  %v4937 = vpop.f32.mrf.mxu0
  %v4938 = vadd.f32 %v4875, %v4937
  %v4939 = vpop.f32.mrf.mxu0
  %v4940 = vadd.f32 %v4877, %v4939
  %4941 = vmatmul.bf16.gmra.mxu0 %v1147
  %v4942 = vpop.f32.mrf.mxu0
  %v4943 = vadd.f32 %v4880, %v4942
  %v4944 = vpop.f32.mrf.mxu0
  %v4945 = vadd.f32 %v4882, %v4944
  %4946 = vmatmul.bf16.gmra.mxu0 %v1165
  %v4947 = vpop.f32.mrf.mxu0
  %v4948 = vadd.f32 %v4885, %v4947
  %v4949 = vpop.f32.mrf.mxu0
  %v4950 = vadd.f32 %v4887, %v4949
  %4951 = vmatmul.bf16.gmra.mxu0 %v1183
  %v4952 = vpop.f32.mrf.mxu0
  %v4953 = vadd.f32 %v4890, %v4952
  %v4954 = vpop.f32.mrf.mxu0
  %v4955 = vadd.f32 %v4892, %v4954
  %4956 = vmatmul.bf16.gmra.mxu0 %v1201
  %v4957 = vpop.f32.mrf.mxu0
  %v4958 = vadd.f32 %v4895, %v4957
  %v4959 = vpop.f32.mrf.mxu0
  %v4960 = vadd.f32 %v4897, %v4959
  %4961 = vmatmul.bf16.gmra.mxu0 %v1219
  %v4962 = vpop.f32.mrf.mxu0
  %v4963 = vadd.f32 %v4900, %v4962
  %v4964 = vpop.f32.mrf.mxu0
  %v4965 = vadd.f32 %v4902, %v4964
  %4966 = vmatmul.bf16.gmra.mxu0 %v1237
  %v4967 = vpop.f32.mrf.mxu0
  %v4968 = vadd.f32 %v4905, %v4967
  %v4969 = vpop.f32.mrf.mxu0
  %v4970 = vadd.f32 %v4907, %v4969
  %4971 = vmatmul.bf16.gmra.mxu0 %v1255
  %v4972 = vpop.f32.mrf.mxu0
  %v4973 = vadd.f32 %v4910, %v4972
  %v4974 = vpop.f32.mrf.mxu0
  %4975 = vdwg.mxu0
  %4976 = vmatpush.bf16.msra.mxu0 %v2576
  %4977 = vmatpush.bf16.msra.mxu0 %v2574
  %4978 = vmatpush.bf16.msra.mxu0 %v2572
  %4979 = vmatpush.bf16.msra.mxu0 %v2570
  %4980 = vmatpush.bf16.msra.mxu0 %v2568
  %4981 = vmatpush.bf16.msra.mxu0 %v2566
  %4982 = vmatpush.bf16.msra.mxu0 %v2564
  %4983 = vmatpush.bf16.msra.mxu0 %v2562
  %4984 = vmatmul.bf16.gmra.mxu0 %v1076
  %v4985 = vpop.f32.mrf.mxu0
  %v4986 = vadd.f32 %v4923, %v4985
  %v4987 = vpop.f32.mrf.mxu0
  %v4988 = vadd.f32 %v4925, %v4987
  %4989 = vmatmul.bf16.gmra.mxu0 %v1094
  %v4990 = vpop.f32.mrf.mxu0
  %v4991 = vadd.f32 %v4928, %v4990
  %v4992 = vpop.f32.mrf.mxu0
  %v4993 = vadd.f32 %v4930, %v4992
  %4994 = vmatmul.bf16.gmra.mxu0 %v1112
  %v4995 = vpop.f32.mrf.mxu0
  %v4996 = vadd.f32 %v4933, %v4995
  %v4997 = vpop.f32.mrf.mxu0
  %v4998 = vadd.f32 %v4935, %v4997
  %4999 = vmatmul.bf16.gmra.mxu0 %v1130
  %v5000 = vpop.f32.mrf.mxu0
  %v5001 = vadd.f32 %v4938, %v5000
  %v5002 = vpop.f32.mrf.mxu0
  %v5003 = vadd.f32 %v4940, %v5002
  %5004 = vmatmul.bf16.gmra.mxu0 %v1148
  %v5005 = vpop.f32.mrf.mxu0
  %v5006 = vadd.f32 %v4943, %v5005
  %v5007 = vpop.f32.mrf.mxu0
  %v5008 = vadd.f32 %v4945, %v5007
  %5009 = vmatmul.bf16.gmra.mxu0 %v1166
  %v5010 = vpop.f32.mrf.mxu0
  %v5011 = vadd.f32 %v4948, %v5010
  %v5012 = vpop.f32.mrf.mxu0
  %v5013 = vadd.f32 %v4950, %v5012
  %5014 = vmatmul.bf16.gmra.mxu0 %v1184
  %v5015 = vpop.f32.mrf.mxu0
  %v5016 = vadd.f32 %v4953, %v5015
  %v5017 = vpop.f32.mrf.mxu0
  %v5018 = vadd.f32 %v4955, %v5017
  %5019 = vmatmul.bf16.gmra.mxu0 %v1202
  %v5020 = vpop.f32.mrf.mxu0
  %v5021 = vadd.f32 %v4958, %v5020
  %v5022 = vpop.f32.mrf.mxu0
  %v5023 = vadd.f32 %v4960, %v5022
  %5024 = vmatmul.bf16.gmra.mxu0 %v1220
  %v5025 = vpop.f32.mrf.mxu0
  %v5026 = vadd.f32 %v4963, %v5025
  %v5027 = vpop.f32.mrf.mxu0
  %v5028 = vadd.f32 %v4965, %v5027
  %5029 = vmatmul.bf16.gmra.mxu0 %v1238
  %v5030 = vpop.f32.mrf.mxu0
  %v5031 = vadd.f32 %v4968, %v5030
  %v5032 = vpop.f32.mrf.mxu0
  %v5033 = vadd.f32 %v4970, %v5032
  %5034 = vmatmul.bf16.gmra.mxu0 %v1256
  %v5035 = vpop.f32.mrf.mxu0
  %v5036 = vadd.f32 %v4973, %v5035
  %v5037 = vpop.f32.mrf.mxu0
  %5038 = vdwg.mxu0
  %5039 = vmatpush.bf16.msra.mxu0 %v2592
  %5040 = vmatpush.bf16.msra.mxu0 %v2590
  %5041 = vmatpush.bf16.msra.mxu0 %v2588
  %5042 = vmatpush.bf16.msra.mxu0 %v2586
  %5043 = vmatpush.bf16.msra.mxu0 %v2584
  %5044 = vmatpush.bf16.msra.mxu0 %v2582
  %5045 = vmatpush.bf16.msra.mxu0 %v2580
  %5046 = vmatpush.bf16.msra.mxu0 %v2578
  %5047 = vmatmul.bf16.gmra.mxu0 %v1077
  %v5048 = vpop.f32.mrf.mxu0
  %v5049 = vadd.f32 %v4986, %v5048
  %v5050 = vpop.f32.mrf.mxu0
  %v5051 = vadd.f32 %v4988, %v5050
  %5052 = vmatmul.bf16.gmra.mxu0 %v1095
  %v5053 = vpop.f32.mrf.mxu0
  %v5054 = vadd.f32 %v4991, %v5053
  %v5055 = vpop.f32.mrf.mxu0
  %v5056 = vadd.f32 %v4993, %v5055
  %5057 = vmatmul.bf16.gmra.mxu0 %v1113
  %v5058 = vpop.f32.mrf.mxu0
  %v5059 = vadd.f32 %v4996, %v5058
  %v5060 = vpop.f32.mrf.mxu0
  %v5061 = vadd.f32 %v4998, %v5060
  %5062 = vmatmul.bf16.gmra.mxu0 %v1131
  %v5063 = vpop.f32.mrf.mxu0
  %v5064 = vadd.f32 %v5001, %v5063
  %v5065 = vpop.f32.mrf.mxu0
  %v5066 = vadd.f32 %v5003, %v5065
  %5067 = vmatmul.bf16.gmra.mxu0 %v1149
  %v5068 = vpop.f32.mrf.mxu0
  %v5069 = vadd.f32 %v5006, %v5068
  %v5070 = vpop.f32.mrf.mxu0
  %v5071 = vadd.f32 %v5008, %v5070
  %5072 = vmatmul.bf16.gmra.mxu0 %v1167
  %v5073 = vpop.f32.mrf.mxu0
  %v5074 = vadd.f32 %v5011, %v5073
  %v5075 = vpop.f32.mrf.mxu0
  %v5076 = vadd.f32 %v5013, %v5075
  %5077 = vmatmul.bf16.gmra.mxu0 %v1185
  %v5078 = vpop.f32.mrf.mxu0
  %v5079 = vadd.f32 %v5016, %v5078
  %v5080 = vpop.f32.mrf.mxu0
  %v5081 = vadd.f32 %v5018, %v5080
  %5082 = vmatmul.bf16.gmra.mxu0 %v1203
  %v5083 = vpop.f32.mrf.mxu0
  %v5084 = vadd.f32 %v5021, %v5083
  %v5085 = vpop.f32.mrf.mxu0
  %v5086 = vadd.f32 %v5023, %v5085
  %5087 = vmatmul.bf16.gmra.mxu0 %v1221
  %v5088 = vpop.f32.mrf.mxu0
  %v5089 = vadd.f32 %v5026, %v5088
  %v5090 = vpop.f32.mrf.mxu0
  %v5091 = vadd.f32 %v5028, %v5090
  %5092 = vmatmul.bf16.gmra.mxu0 %v1239
  %v5093 = vpop.f32.mrf.mxu0
  %v5094 = vadd.f32 %v5031, %v5093
  %v5095 = vpop.f32.mrf.mxu0
  %v5096 = vadd.f32 %v5033, %v5095
  %5097 = vmatmul.bf16.gmra.mxu0 %v1257
  %v5098 = vpop.f32.mrf.mxu0
  %v5099 = vadd.f32 %v5036, %v5098
  %v5100 = vpop.f32.mrf.mxu0
  %5101 = vdwg.mxu0
  %5102 = vmatpush.bf16.msra.mxu0 %v2608
  %5103 = vmatpush.bf16.msra.mxu0 %v2606
  %5104 = vmatpush.bf16.msra.mxu0 %v2604
  %5105 = vmatpush.bf16.msra.mxu0 %v2602
  %5106 = vmatpush.bf16.msra.mxu0 %v2600
  %5107 = vmatpush.bf16.msra.mxu0 %v2598
  %5108 = vmatpush.bf16.msra.mxu0 %v2596
  %5109 = vmatpush.bf16.msra.mxu0 %v2594
  %5110 = vmatmul.bf16.gmra.mxu0 %v1078
  %v5111 = vpop.f32.mrf.mxu0
  %v5112 = vadd.f32 %v5049, %v5111
  %v5113 = vpop.f32.mrf.mxu0
  %v5114 = vadd.f32 %v5051, %v5113
  %5115 = vmatmul.bf16.gmra.mxu0 %v1096
  %v5116 = vpop.f32.mrf.mxu0
  %v5117 = vadd.f32 %v5054, %v5116
  %v5118 = vpop.f32.mrf.mxu0
  %v5119 = vadd.f32 %v5056, %v5118
  %5120 = vmatmul.bf16.gmra.mxu0 %v1114
  %v5121 = vpop.f32.mrf.mxu0
  %v5122 = vadd.f32 %v5059, %v5121
  %v5123 = vpop.f32.mrf.mxu0
  %v5124 = vadd.f32 %v5061, %v5123
  %5125 = vmatmul.bf16.gmra.mxu0 %v1132
  %v5126 = vpop.f32.mrf.mxu0
  %v5127 = vadd.f32 %v5064, %v5126
  %v5128 = vpop.f32.mrf.mxu0
  %v5129 = vadd.f32 %v5066, %v5128
  %5130 = vmatmul.bf16.gmra.mxu0 %v1150
  %v5131 = vpop.f32.mrf.mxu0
  %v5132 = vadd.f32 %v5069, %v5131
  %v5133 = vpop.f32.mrf.mxu0
  %v5134 = vadd.f32 %v5071, %v5133
  %5135 = vmatmul.bf16.gmra.mxu0 %v1168
  %v5136 = vpop.f32.mrf.mxu0
  %v5137 = vadd.f32 %v5074, %v5136
  %v5138 = vpop.f32.mrf.mxu0
  %v5139 = vadd.f32 %v5076, %v5138
  %5140 = vmatmul.bf16.gmra.mxu0 %v1186
  %v5141 = vpop.f32.mrf.mxu0
  %v5142 = vadd.f32 %v5079, %v5141
  %v5143 = vpop.f32.mrf.mxu0
  %v5144 = vadd.f32 %v5081, %v5143
  %5145 = vmatmul.bf16.gmra.mxu0 %v1204
  %v5146 = vpop.f32.mrf.mxu0
  %v5147 = vadd.f32 %v5084, %v5146
  %v5148 = vpop.f32.mrf.mxu0
  %v5149 = vadd.f32 %v5086, %v5148
  %5150 = vmatmul.bf16.gmra.mxu0 %v1222
  %v5151 = vpop.f32.mrf.mxu0
  %v5152 = vadd.f32 %v5089, %v5151
  %v5153 = vpop.f32.mrf.mxu0
  %v5154 = vadd.f32 %v5091, %v5153
  %5155 = vmatmul.bf16.gmra.mxu0 %v1240
  %v5156 = vpop.f32.mrf.mxu0
  %v5157 = vadd.f32 %v5094, %v5156
  %v5158 = vpop.f32.mrf.mxu0
  %v5159 = vadd.f32 %v5096, %v5158
  %5160 = vmatmul.bf16.gmra.mxu0 %v1258
  %v5161 = vpop.f32.mrf.mxu0
  %v5162 = vadd.f32 %v5099, %v5161
  %v5163 = vpop.f32.mrf.mxu0
  %5164 = vdwg.mxu0
  %v5165 = vld [vmem:[%s2] sm:$0x3]
  %v5167 = vperm.slane %v5165, 0
  %v5168 = vperm.slane %v5165, 1
  %v5171 = vmul.f32 %v3978, %v5167
  %v5172 = vmul.f32 %v5112, %v5168
  %v5173 = vmul.f32 %v3980, %v5167
  %v5174 = vmul.f32 %v5114, %v5168
  %v5175 = vmul.f32 %v3983, %v5167
  %v5176 = vmul.f32 %v5117, %v5168
  %v5177 = vmul.f32 %v3985, %v5167
  %v5178 = vmul.f32 %v5119, %v5168
  %v5179 = vmul.f32 %v3988, %v5167
  %v5180 = vmul.f32 %v5122, %v5168
  %v5181 = vmul.f32 %v3990, %v5167
  %v5182 = vmul.f32 %v5124, %v5168
  %v5183 = vmul.f32 %v3993, %v5167
  %v5184 = vmul.f32 %v5127, %v5168
  %v5185 = vmul.f32 %v3995, %v5167
  %v5186 = vmul.f32 %v5129, %v5168
  %v5187 = vmul.f32 %v3998, %v5167
  %v5188 = vmul.f32 %v5132, %v5168
  %v5189 = vmul.f32 %v4000, %v5167
  %v5190 = vmul.f32 %v5134, %v5168
  %v5191 = vmul.f32 %v4003, %v5167
  %v5192 = vmul.f32 %v5137, %v5168
  %v5193 = vmul.f32 %v4005, %v5167
  %v5194 = vmul.f32 %v5139, %v5168
  %v5195 = vmul.f32 %v4008, %v5167
  %v5196 = vmul.f32 %v5142, %v5168
  %v5197 = vmul.f32 %v4010, %v5167
  %v5198 = vmul.f32 %v5144, %v5168
  %v5199 = vmul.f32 %v4013, %v5167
  %v5200 = vmul.f32 %v5147, %v5168
  %v5201 = vmul.f32 %v4015, %v5167
  %v5202 = vmul.f32 %v5149, %v5168
  %v5203 = vmul.f32 %v4018, %v5167
  %v5204 = vmul.f32 %v5152, %v5168
  %v5205 = vmul.f32 %v4020, %v5167
  %v5206 = vmul.f32 %v5154, %v5168
  %v5207 = vmul.f32 %v4023, %v5167
  %v5208 = vmul.f32 %v5157, %v5168
  %v5209 = vmul.f32 %v4025, %v5167
  %v5210 = vmul.f32 %v5159, %v5168
  %v5211 = vmul.f32 %v4028, %v5167
  %v5212 = vmul.f32 %v5162, %v5168
  %v5213 = vld [vmem:[%s3] sm:$0x3]
  %v5215 = vperm.slane %v5213, 0
  %v5216 = vperm.slane %v5213, 1
  %v5219 = vadd.f32 %v5171, %v5215
  %v5220 = vadd.f32 %v5172, %v5216
  %v5221 = vadd.f32 %v5173, %v5215
  %v5222 = vadd.f32 %v5174, %v5216
  %v5223 = vadd.f32 %v5175, %v5215
  %v5224 = vadd.f32 %v5176, %v5216
  %v5225 = vadd.f32 %v5177, %v5215
  %v5226 = vadd.f32 %v5178, %v5216
  %v5227 = vadd.f32 %v5179, %v5215
  %v5228 = vadd.f32 %v5180, %v5216
  %v5229 = vadd.f32 %v5181, %v5215
  %v5230 = vadd.f32 %v5182, %v5216
  %v5231 = vadd.f32 %v5183, %v5215
  %v5232 = vadd.f32 %v5184, %v5216
  %v5233 = vadd.f32 %v5185, %v5215
  %v5234 = vadd.f32 %v5186, %v5216
  %v5235 = vadd.f32 %v5187, %v5215
  %v5236 = vadd.f32 %v5188, %v5216
  %v5237 = vadd.f32 %v5189, %v5215
  %v5238 = vadd.f32 %v5190, %v5216
  %v5239 = vadd.f32 %v5191, %v5215
  %v5240 = vadd.f32 %v5192, %v5216
  %v5241 = vadd.f32 %v5193, %v5215
  %v5242 = vadd.f32 %v5194, %v5216
  %v5243 = vadd.f32 %v5195, %v5215
  %v5244 = vadd.f32 %v5196, %v5216
  %v5245 = vadd.f32 %v5197, %v5215
  %v5246 = vadd.f32 %v5198, %v5216
  %v5247 = vadd.f32 %v5199, %v5215
  %v5248 = vadd.f32 %v5200, %v5216
  %v5249 = vadd.f32 %v5201, %v5215
  %v5250 = vadd.f32 %v5202, %v5216
  %v5251 = vadd.f32 %v5203, %v5215
  %v5252 = vadd.f32 %v5204, %v5216
  %v5253 = vadd.f32 %v5205, %v5215
  %v5254 = vadd.f32 %v5206, %v5216
  %v5255 = vadd.f32 %v5207, %v5215
  %v5256 = vadd.f32 %v5208, %v5216
  %v5257 = vadd.f32 %v5209, %v5215
  %v5258 = vadd.f32 %v5210, %v5216
  %v5259 = vadd.f32 %v5211, %v5215
  %v5260 = vadd.f32 %v5212, %v5216
  %v5261 = vmax.f32 %v5219, 0.0
  %v5262 = vmax.f32 %v5220, 0.0
  %v5263 = vmax.f32 %v5221, 0.0
  %v5264 = vmax.f32 %v5222, 0.0
  %v5265 = vmax.f32 %v5223, 0.0
  %v5266 = vmax.f32 %v5224, 0.0
  %v5267 = vmax.f32 %v5225, 0.0
  %v5268 = vmax.f32 %v5226, 0.0
  %v5269 = vmax.f32 %v5227, 0.0
  %v5270 = vmax.f32 %v5228, 0.0
  %v5271 = vmax.f32 %v5229, 0.0
  %v5272 = vmax.f32 %v5230, 0.0
  %v5273 = vmax.f32 %v5231, 0.0
  %v5274 = vmax.f32 %v5232, 0.0
  %v5275 = vmax.f32 %v5233, 0.0
  %v5276 = vmax.f32 %v5234, 0.0
  %v5277 = vmax.f32 %v5235, 0.0
  %v5278 = vmax.f32 %v5236, 0.0
  %v5279 = vmax.f32 %v5237, 0.0
  %v5280 = vmax.f32 %v5238, 0.0
  %v5281 = vmax.f32 %v5239, 0.0
  %v5282 = vmax.f32 %v5240, 0.0
  %v5283 = vmax.f32 %v5241, 0.0
  %v5284 = vmax.f32 %v5242, 0.0
  %v5285 = vmax.f32 %v5243, 0.0
  %v5286 = vmax.f32 %v5244, 0.0
  %v5287 = vmax.f32 %v5245, 0.0
  %v5288 = vmax.f32 %v5246, 0.0
  %v5289 = vmax.f32 %v5247, 0.0
  %v5290 = vmax.f32 %v5248, 0.0
  %v5291 = vmax.f32 %v5249, 0.0
  %v5292 = vmax.f32 %v5250, 0.0
  %v5293 = vmax.f32 %v5251, 0.0
  %v5294 = vmax.f32 %v5252, 0.0
  %v5295 = vmax.f32 %v5253, 0.0
  %v5296 = vmax.f32 %v5254, 0.0
  %v5297 = vmax.f32 %v5255, 0.0
  %v5298 = vmax.f32 %v5256, 0.0
  %v5299 = vmax.f32 %v5257, 0.0
  %v5300 = vmax.f32 %v5258, 0.0
  %v5301 = vmax.f32 %v5259, 0.0
  %v5302 = vmax.f32 %v5260, 0.0
  %5303 = vst [vmem:[%s4] sm:$0xff] %v5261
  %5304 = vst [vmem:[%s4 + $0x8] sm:$0xff] %v5262
  %5305 = vst [vmem:[%s4 + $0x10] sm:$0xff] %v5263
  %5306 = vst [vmem:[%s4 + $0x18] sm:$0xff] %v5264
  %5307 = vst [vmem:[%s4 + $0x20] sm:$0xff] %v5265
  %5308 = vst [vmem:[%s4 + $0x28] sm:$0xff] %v5266
  %5309 = vst [vmem:[%s4 + $0x30] sm:$0xff] %v5267
  %5310 = vst [vmem:[%s4 + $0x38] sm:$0xff] %v5268
  %5311 = vst [vmem:[%s4 + $0x40] sm:$0xff] %v5269
  %5312 = vst [vmem:[%s4 + $0x48] sm:$0xff] %v5270
  %5313 = vst [vmem:[%s4 + $0x50] sm:$0xff] %v5271
  %5314 = vst [vmem:[%s4 + $0x58] sm:$0xff] %v5272
  %5315 = vst [vmem:[%s4 + $0x60] sm:$0xff] %v5273
  %5316 = vst [vmem:[%s4 + $0x68] sm:$0xff] %v5274
  %5317 = vst [vmem:[%s4 + $0x70] sm:$0xff] %v5275
  %5318 = vst [vmem:[%s4 + $0x78] sm:$0xff] %v5276
  %5319 = vst [vmem:[%s4 + $0x80] sm:$0xff] %v5277
  %5320 = vst [vmem:[%s4 + $0x88] sm:$0xff] %v5278
  %5321 = vst [vmem:[%s4 + $0x90] sm:$0xff] %v5279
  %5322 = vst [vmem:[%s4 + $0x98] sm:$0xff] %v5280
  %5323 = vst [vmem:[%s4 + $0xa0] sm:$0xff] %v5281
  %5324 = vst [vmem:[%s4 + $0xa8] sm:$0xff] %v5282
  %5325 = vst [vmem:[%s4 + $0xb0] sm:$0xff] %v5283
  %5326 = vst [vmem:[%s4 + $0xb8] sm:$0xff] %v5284
  %5327 = vst [vmem:[%s4 + $0xc0] sm:$0xff] %v5285
  %5328 = vst [vmem:[%s4 + $0xc8] sm:$0xff] %v5286
  %5329 = vst [vmem:[%s4 + $0xd0] sm:$0xff] %v5287
  %5330 = vst [vmem:[%s4 + $0xd8] sm:$0xff] %v5288
  %5331 = vst [vmem:[%s4 + $0xe0] sm:$0xff] %v5289
  %5332 = vst [vmem:[%s4 + $0xe8] sm:$0xff] %v5290
  %5333 = vst [vmem:[%s4 + $0xf0] sm:$0xff] %v5291
  %5334 = vst [vmem:[%s4 + $0xf8] sm:$0xff] %v5292
  %5335 = vst [vmem:[%s4 + $0x100] sm:$0xff] %v5293
  %5336 = vst [vmem:[%s4 + $0x108] sm:$0xff] %v5294
  %5337 = vst [vmem:[%s4 + $0x110] sm:$0xff] %v5295
  %5338 = vst [vmem:[%s4 + $0x118] sm:$0xff] %v5296
  %5339 = vst [vmem:[%s4 + $0x120] sm:$0xff] %v5297
  %5340 = vst [vmem:[%s4 + $0x128] sm:$0xff] %v5298
  %5341 = vst [vmem:[%s4 + $0x130] sm:$0xff] %v5299
  %5342 = vst [vmem:[%s4 + $0x138] sm:$0xff] %v5300
  %5343 = vst [vmem:[%s4 + $0x140] sm:$0xff] %v5301
  %5344 = vst [vmem:[%s4 + $0x148] sm:$0xff] %v5302
  // Predicated region
  $region18: #{mixed_b_forward.4} parent=0 // pred_check
    _
  $region19: #{mixed_b_forward.4} parent=0 // pred_check_branch
    %5346 = sbr.rel (0) target = $region21
  $region20: #{mixed_b_forward.4} parent=0 // pred_region
    _
  $region21: #{mixed_b_forward.4} parent=0 // pred_fallthru
    _
  // Predicated region
  $region22: #{mixed_b_forward.4} parent=0 // pred_check
    _
  $region23: #{mixed_b_forward.4} parent=0 // pred_check_branch
    %5348 = sbr.rel (0) target = $region25
  $region24: #{mixed_b_forward.4} parent=0 // pred_region
    _
  $region25: #{mixed_b_forward.4} parent=0 // pred_fallthru
    _

// kernel: mixed_b_forward.5
$region0: #{mixed_b_forward.5}
  #allocation0 [shape = 'u32[]', space=smem, size = 0x4, offset = 0x4, fixed_abs, tag = 'smem constant byte address 0x4 - core index']
  #allocation1 [shape = 'u32[72,128]{1,0:T(1,128)}', space=vmem, size = 0x9000, scoped, tag = 'internal scratch']
  %s0 = inlined_call_operand.vmem [shape: bf16[32,2880], index: 0, kind: input, shape index: {}]
  %s1 = inlined_call_operand.vmem [shape: bf16[32,2304], index: 1, kind: input, shape index: {}]
  %s2 = inlined_call_operand.vmem [shape: bf16[2880,384], index: 2, kind: input, shape index: {}]
  %s3 = inlined_call_operand.vmem [shape: bf16[2304,384], index: 3, kind: input, shape index: {}]
  %s4 = inlined_call_operand.vmem [shape: f32[1,384], index: 4, kind: input, shape index: {}]
  %s5 = inlined_call_operand.vmem [shape: f32[1,384], index: 5, kind: input, shape index: {}]
  %s6 = inlined_call_operand.vmem [shape: f32[1,384], index: 6, kind: input, shape index: {}]
  %s7 = inlined_call_operand.vmem [shape: f32[1,384], index: 7, kind: input, shape index: {}]
  %s8 = inlined_call_operand.vmem [shape: f32[32,1088], index: 8, kind: output, shape index: {}]
  %s9 = sld [smem:[#allocation0]]
  $region42: #{mixed_b_forward.5} parent=0
    _
  %s11 = ssub.s32 1, %s9
  %s12 = scalar_select 0, %s11, %s9
  // Predicated region
  $region2: #{mixed_b_forward.5} parent=0 // pred_check
    _
  $region3: #{mixed_b_forward.5} parent=0 // pred_check_branch
    %14 = sbr.rel (0) target = $region5
  $region4: #{mixed_b_forward.5} parent=0 // pred_region
    _
  $region5: #{mixed_b_forward.5} parent=0 // pred_fallthru
    _
  // Predicated region
  $region6: #{mixed_b_forward.5} parent=0 // pred_check
    _
  $region7: #{mixed_b_forward.5} parent=0 // pred_check_branch
    %16 = sbr.rel (0) target = $region9
  $region8: #{mixed_b_forward.5} parent=0 // pred_region
    _
  $region9: #{mixed_b_forward.5} parent=0 // pred_fallthru
    _
  // Predicated region
  $region10: #{mixed_b_forward.5} parent=0 // pred_check
    _
  $region11: #{mixed_b_forward.5} parent=0 // pred_check_branch
    %18 = sbr.rel (0) target = $region13
  $region12: #{mixed_b_forward.5} parent=0 // pred_region
    _
  $region13: #{mixed_b_forward.5} parent=0 // pred_fallthru
    _
  // Predicated region
  $region14: #{mixed_b_forward.5} parent=0 // pred_check
    _
  $region15: #{mixed_b_forward.5} parent=0 // pred_check_branch
    %20 = sbr.rel (0) target = $region17
  $region16: #{mixed_b_forward.5} parent=0 // pred_region
    _
  $region17: #{mixed_b_forward.5} parent=0 // pred_fallthru
    _
  // Predicated region
  $region18: #{mixed_b_forward.5} parent=0 // pred_check
    _
  $region19: #{mixed_b_forward.5} parent=0 // pred_check_branch
    %22 = sbr.rel (0) target = $region21
  $region20: #{mixed_b_forward.5} parent=0 // pred_region
    _
  $region21: #{mixed_b_forward.5} parent=0 // pred_fallthru
    _
  // Predicated region
  $region22: #{mixed_b_forward.5} parent=0 // pred_check
    _
  $region23: #{mixed_b_forward.5} parent=0 // pred_check_branch
    %24 = sbr.rel (0) target = $region25
  $region24: #{mixed_b_forward.5} parent=0 // pred_region
    _
  $region25: #{mixed_b_forward.5} parent=0 // pred_fallthru
    _
  // Predicated region
  $region26: #{mixed_b_forward.5} parent=0 // pred_check
    _
  $region27: #{mixed_b_forward.5} parent=0 // pred_check_branch
    %26 = sbr.rel (0) target = $region29
  $region28: #{mixed_b_forward.5} parent=0 // pred_region
    _
  $region29: #{mixed_b_forward.5} parent=0 // pred_fallthru
    _
  // Predicated region
  $region30: #{mixed_b_forward.5} parent=0 // pred_check
    _
  $region31: #{mixed_b_forward.5} parent=0 // pred_check_branch
    %28 = sbr.rel (0) target = $region33
  $region32: #{mixed_b_forward.5} parent=0 // pred_region
    _
  $region33: #{mixed_b_forward.5} parent=0 // pred_fallthru
    _
  %v30 = vld [vmem:[%s0] sm:$0xff]
  %v31 = vld [vmem:[%s0 + $0x8] sm:$0xff]
  %v32 = vld [vmem:[%s0 + $0x10] sm:$0xff]
  %v33 = vld [vmem:[%s0 + $0x18] sm:$0xff]
  %v34 = vld [vmem:[%s0 + $0x20] sm:$0xff]
  %v35 = vld [vmem:[%s0 + $0x28] sm:$0xff]
  %v36 = vld [vmem:[%s0 + $0x30] sm:$0xff]
  %v37 = vld [vmem:[%s0 + $0x38] sm:$0xff]
  %v38 = vld [vmem:[%s0 + $0x40] sm:$0xff]
  %v39 = vld [vmem:[%s0 + $0x48] sm:$0xff]
  %v40 = vld [vmem:[%s0 + $0x50] sm:$0xff]
  %v41 = vld [vmem:[%s0 + $0x58] sm:$0xf]
  %v42 = vld [vmem:[%s0 + $0x5c] sm:$0xff]
  %v43 = vld [vmem:[%s0 + $0x64] sm:$0xff]
  %v44 = vld [vmem:[%s0 + $0x6c] sm:$0xff]
  %v45 = vld [vmem:[%s0 + $0x74] sm:$0xff]
  %v46 = vld [vmem:[%s0 + $0x7c] sm:$0xff]
  %v47 = vld [vmem:[%s0 + $0x84] sm:$0xff]
  %v48 = vld [vmem:[%s0 + $0x8c] sm:$0xff]
  %v49 = vld [vmem:[%s0 + $0x94] sm:$0xff]
  %v50 = vld [vmem:[%s0 + $0x9c] sm:$0xff]
  %v51 = vld [vmem:[%s0 + $0xa4] sm:$0xff]
  %v52 = vld [vmem:[%s0 + $0xac] sm:$0xff]
  %v53 = vld [vmem:[%s0 + $0xb4] sm:$0xf]
  %v54 = vld [vmem:[%s0 + $0xb8] sm:$0xff]
  %v55 = vld [vmem:[%s0 + $0xc0] sm:$0xff]
  %v56 = vld [vmem:[%s0 + $0xc8] sm:$0xff]
  %v57 = vld [vmem:[%s0 + $0xd0] sm:$0xff]
  %v58 = vld [vmem:[%s0 + $0xd8] sm:$0xff]
  %v59 = vld [vmem:[%s0 + $0xe0] sm:$0xff]
  %v60 = vld [vmem:[%s0 + $0xe8] sm:$0xff]
  %v61 = vld [vmem:[%s0 + $0xf0] sm:$0xff]
  %v62 = vld [vmem:[%s0 + $0xf8] sm:$0xff]
  %v63 = vld [vmem:[%s0 + $0x100] sm:$0xff]
  %v64 = vld [vmem:[%s0 + $0x108] sm:$0xff]
  %v65 = vld [vmem:[%s0 + $0x110] sm:$0xf]
  %v66 = vld [vmem:[%s0 + $0x114] sm:$0xff]
  %v67 = vld [vmem:[%s0 + $0x11c] sm:$0xff]
  %v68 = vld [vmem:[%s0 + $0x124] sm:$0xff]
  %v69 = vld [vmem:[%s0 + $0x12c] sm:$0xff]
  %v70 = vld [vmem:[%s0 + $0x134] sm:$0xff]
  %v71 = vld [vmem:[%s0 + $0x13c] sm:$0xff]
  %v72 = vld [vmem:[%s0 + $0x144] sm:$0xff]
  %v73 = vld [vmem:[%s0 + $0x14c] sm:$0xff]
  %v74 = vld [vmem:[%s0 + $0x154] sm:$0xff]
  %v75 = vld [vmem:[%s0 + $0x15c] sm:$0xff]
  %v76 = vld [vmem:[%s0 + $0x164] sm:$0xff]
  %v77 = vld [vmem:[%s0 + $0x16c] sm:$0xf]
  %v78 = vld [vmem:[%s2] sm:$0xff]
  %v79 = vld [vmem:[%s2 + $0x8] sm:$0xf]
  %v80 = vld [vmem:[%s2 + $0xc] sm:$0xff]
  %v81 = vld [vmem:[%s2 + $0x14] sm:$0xf]
  %v82 = vld [vmem:[%s2 + $0x18] sm:$0xff]
  %v83 = vld [vmem:[%s2 + $0x20] sm:$0xf]
  %v84 = vld [vmem:[%s2 + $0x24] sm:$0xff]
  %v85 = vld [vmem:[%s2 + $0x2c] sm:$0xf]
  %v86 = vld [vmem:[%s2 + $0x30] sm:$0xff]
  %v87 = vld [vmem:[%s2 + $0x38] sm:$0xf]
  %v88 = vld [vmem:[%s2 + $0x3c] sm:$0xff]
  %v89 = vld [vmem:[%s2 + $0x44] sm:$0xf]
  %v90 = vld [vmem:[%s2 + $0x48] sm:$0xff]
  %v91 = vld [vmem:[%s2 + $0x50] sm:$0xf]
  %v92 = vld [vmem:[%s2 + $0x54] sm:$0xff]
  %v93 = vld [vmem:[%s2 + $0x5c] sm:$0xf]
  %v94 = vld [vmem:[%s2 + $0x60] sm:$0xff]
  %v95 = vld [vmem:[%s2 + $0x68] sm:$0xf]
  %v96 = vld [vmem:[%s2 + $0x6c] sm:$0xff]
  %v97 = vld [vmem:[%s2 + $0x74] sm:$0xf]
  %v98 = vld [vmem:[%s2 + $0x78] sm:$0xff]
  %v99 = vld [vmem:[%s2 + $0x80] sm:$0xf]
  %v100 = vld [vmem:[%s2 + $0x84] sm:$0xff]
  %v101 = vld [vmem:[%s2 + $0x8c] sm:$0xf]
  %v102 = vld [vmem:[%s2 + $0x90] sm:$0xff]
  %v103 = vld [vmem:[%s2 + $0x98] sm:$0xf]
  %v104 = vld [vmem:[%s2 + $0x9c] sm:$0xff]
  %v105 = vld [vmem:[%s2 + $0xa4] sm:$0xf]
  %v106 = vld [vmem:[%s2 + $0xa8] sm:$0xff]
  %v107 = vld [vmem:[%s2 + $0xb0] sm:$0xf]
  %v108 = vld [vmem:[%s2 + $0xb4] sm:$0xff]
  %v109 = vld [vmem:[%s2 + $0xbc] sm:$0xf]
  %v110 = vld [vmem:[%s2 + $0xc0] sm:$0xff]
  %v111 = vld [vmem:[%s2 + $0xc8] sm:$0xf]
  %v112 = vld [vmem:[%s2 + $0xcc] sm:$0xff]
  %v113 = vld [vmem:[%s2 + $0xd4] sm:$0xf]
  %v114 = vld [vmem:[%s2 + $0xd8] sm:$0xff]
  %v115 = vld [vmem:[%s2 + $0xe0] sm:$0xf]
  %v116 = vld [vmem:[%s2 + $0xe4] sm:$0xff]
  %v117 = vld [vmem:[%s2 + $0xec] sm:$0xf]
  %v118 = vld [vmem:[%s2 + $0xf0] sm:$0xff]
  %v119 = vld [vmem:[%s2 + $0xf8] sm:$0xf]
  %v120 = vld [vmem:[%s2 + $0xfc] sm:$0xff]
  %v121 = vld [vmem:[%s2 + $0x104] sm:$0xf]
  %v122 = vld [vmem:[%s2 + $0x108] sm:$0xff]
  %v123 = vld [vmem:[%s2 + $0x110] sm:$0xf]
  %v124 = vld [vmem:[%s2 + $0x114] sm:$0xff]
  %v125 = vld [vmem:[%s2 + $0x11c] sm:$0xf]
  %v126 = vld [vmem:[%s2 + $0x120] sm:$0xff]
  %v127 = vld [vmem:[%s2 + $0x128] sm:$0xf]
  %v128 = vld [vmem:[%s2 + $0x12c] sm:$0xff]
  %v129 = vld [vmem:[%s2 + $0x134] sm:$0xf]
  %v130 = vld [vmem:[%s2 + $0x138] sm:$0xff]
  %v131 = vld [vmem:[%s2 + $0x140] sm:$0xf]
  %v132 = vld [vmem:[%s2 + $0x144] sm:$0xff]
  %v133 = vld [vmem:[%s2 + $0x14c] sm:$0xf]
  %v134 = vld [vmem:[%s2 + $0x150] sm:$0xff]
  %v135 = vld [vmem:[%s2 + $0x158] sm:$0xf]
  %v136 = vld [vmem:[%s2 + $0x15c] sm:$0xff]
  %v137 = vld [vmem:[%s2 + $0x164] sm:$0xf]
  %v138 = vld [vmem:[%s2 + $0x168] sm:$0xff]
  %v139 = vld [vmem:[%s2 + $0x170] sm:$0xf]
  %v140 = vld [vmem:[%s2 + $0x174] sm:$0xff]
  %v141 = vld [vmem:[%s2 + $0x17c] sm:$0xf]
  %v142 = vld [vmem:[%s2 + $0x180] sm:$0xff]
  %v143 = vld [vmem:[%s2 + $0x188] sm:$0xf]
  %v144 = vld [vmem:[%s2 + $0x18c] sm:$0xff]
  %v145 = vld [vmem:[%s2 + $0x194] sm:$0xf]
  %v146 = vld [vmem:[%s2 + $0x198] sm:$0xff]
  %v147 = vld [vmem:[%s2 + $0x1a0] sm:$0xf]
  %v148 = vld [vmem:[%s2 + $0x1a4] sm:$0xff]
  %v149 = vld [vmem:[%s2 + $0x1ac] sm:$0xf]
  %v150 = vld [vmem:[%s2 + $0x1b0] sm:$0xff]
  %v151 = vld [vmem:[%s2 + $0x1b8] sm:$0xf]
  %v152 = vld [vmem:[%s2 + $0x1bc] sm:$0xff]
  %v153 = vld [vmem:[%s2 + $0x1c4] sm:$0xf]
  %v154 = vld [vmem:[%s2 + $0x1c8] sm:$0xff]
  %v155 = vld [vmem:[%s2 + $0x1d0] sm:$0xf]
  %v156 = vld [vmem:[%s2 + $0x1d4] sm:$0xff]
  %v157 = vld [vmem:[%s2 + $0x1dc] sm:$0xf]
  %v158 = vld [vmem:[%s2 + $0x1e0] sm:$0xff]
  %v159 = vld [vmem:[%s2 + $0x1e8] sm:$0xf]
  %v160 = vld [vmem:[%s2 + $0x1ec] sm:$0xff]
  %v161 = vld [vmem:[%s2 + $0x1f4] sm:$0xf]
  %v162 = vld [vmem:[%s2 + $0x1f8] sm:$0xff]
  %v163 = vld [vmem:[%s2 + $0x200] sm:$0xf]
  %v164 = vld [vmem:[%s2 + $0x204] sm:$0xff]
  %v165 = vld [vmem:[%s2 + $0x20c] sm:$0xf]
  %v166 = vld [vmem:[%s2 + $0x210] sm:$0xff]
  %v167 = vld [vmem:[%s2 + $0x218] sm:$0xf]
  %v168 = vld [vmem:[%s2 + $0x21c] sm:$0xff]
  %v169 = vld [vmem:[%s2 + $0x224] sm:$0xf]
  %v170 = vld [vmem:[%s2 + $0x228] sm:$0xff]
  %v171 = vld [vmem:[%s2 + $0x230] sm:$0xf]
  %v172 = vld [vmem:[%s2 + $0x234] sm:$0xff]
  %v173 = vld [vmem:[%s2 + $0x23c] sm:$0xf]
  %v174 = vld [vmem:[%s2 + $0x240] sm:$0xff]
  %v175 = vld [vmem:[%s2 + $0x248] sm:$0xf]
  %v176 = vld [vmem:[%s2 + $0x24c] sm:$0xff]
  %v177 = vld [vmem:[%s2 + $0x254] sm:$0xf]
  %v178 = vld [vmem:[%s2 + $0x258] sm:$0xff]
  %v179 = vld [vmem:[%s2 + $0x260] sm:$0xf]
  %v180 = vld [vmem:[%s2 + $0x264] sm:$0xff]
  %v181 = vld [vmem:[%s2 + $0x26c] sm:$0xf]
  %v182 = vld [vmem:[%s2 + $0x270] sm:$0xff]
  %v183 = vld [vmem:[%s2 + $0x278] sm:$0xf]
  %v184 = vld [vmem:[%s2 + $0x27c] sm:$0xff]
  %v185 = vld [vmem:[%s2 + $0x284] sm:$0xf]
  %v186 = vld [vmem:[%s2 + $0x288] sm:$0xff]
  %v187 = vld [vmem:[%s2 + $0x290] sm:$0xf]
  %v188 = vld [vmem:[%s2 + $0x294] sm:$0xff]
  %v189 = vld [vmem:[%s2 + $0x29c] sm:$0xf]
  %v190 = vld [vmem:[%s2 + $0x2a0] sm:$0xff]
  %v191 = vld [vmem:[%s2 + $0x2a8] sm:$0xf]
  %v192 = vld [vmem:[%s2 + $0x2ac] sm:$0xff]
  %v193 = vld [vmem:[%s2 + $0x2b4] sm:$0xf]
  %v194 = vld [vmem:[%s2 + $0x2b8] sm:$0xff]
  %v195 = vld [vmem:[%s2 + $0x2c0] sm:$0xf]
  %v196 = vld [vmem:[%s2 + $0x2c4] sm:$0xff]
  %v197 = vld [vmem:[%s2 + $0x2cc] sm:$0xf]
  %v198 = vld [vmem:[%s2 + $0x2d0] sm:$0xff]
  %v199 = vld [vmem:[%s2 + $0x2d8] sm:$0xf]
  %v200 = vld [vmem:[%s2 + $0x2dc] sm:$0xff]
  %v201 = vld [vmem:[%s2 + $0x2e4] sm:$0xf]
  %v202 = vld [vmem:[%s2 + $0x2e8] sm:$0xff]
  %v203 = vld [vmem:[%s2 + $0x2f0] sm:$0xf]
  %v204 = vld [vmem:[%s2 + $0x2f4] sm:$0xff]
  %v205 = vld [vmem:[%s2 + $0x2fc] sm:$0xf]
  %v206 = vld [vmem:[%s2 + $0x300] sm:$0xff]
  %v207 = vld [vmem:[%s2 + $0x308] sm:$0xf]
  %v208 = vld [vmem:[%s2 + $0x30c] sm:$0xff]
  %v209 = vld [vmem:[%s2 + $0x314] sm:$0xf]
  %v210 = vld [vmem:[%s2 + $0x318] sm:$0xff]
  %v211 = vld [vmem:[%s2 + $0x320] sm:$0xf]
  %v212 = vld [vmem:[%s2 + $0x324] sm:$0xff]
  %v213 = vld [vmem:[%s2 + $0x32c] sm:$0xf]
  %v214 = vld [vmem:[%s2 + $0x330] sm:$0xff]
  %v215 = vld [vmem:[%s2 + $0x338] sm:$0xf]
  %v216 = vld [vmem:[%s2 + $0x33c] sm:$0xff]
  %v217 = vld [vmem:[%s2 + $0x344] sm:$0xf]
  %v218 = vld [vmem:[%s2 + $0x348] sm:$0xff]
  %v219 = vld [vmem:[%s2 + $0x350] sm:$0xf]
  %v220 = vld [vmem:[%s2 + $0x354] sm:$0xff]
  %v221 = vld [vmem:[%s2 + $0x35c] sm:$0xf]
  %v222 = vld [vmem:[%s2 + $0x360] sm:$0xff]
  %v223 = vld [vmem:[%s2 + $0x368] sm:$0xf]
  %v224 = vld [vmem:[%s2 + $0x36c] sm:$0xff]
  %v225 = vld [vmem:[%s2 + $0x374] sm:$0xf]
  %v226 = vld [vmem:[%s2 + $0x378] sm:$0xff]
  %v227 = vld [vmem:[%s2 + $0x380] sm:$0xf]
  %v228 = vld [vmem:[%s2 + $0x384] sm:$0xff]
  %v229 = vld [vmem:[%s2 + $0x38c] sm:$0xf]
  %v230 = vld [vmem:[%s2 + $0x390] sm:$0xff]
  %v231 = vld [vmem:[%s2 + $0x398] sm:$0xf]
  %v232 = vld [vmem:[%s2 + $0x39c] sm:$0xff]
  %v233 = vld [vmem:[%s2 + $0x3a4] sm:$0xf]
  %v234 = vld [vmem:[%s2 + $0x3a8] sm:$0xff]
  %v235 = vld [vmem:[%s2 + $0x3b0] sm:$0xf]
  %v236 = vld [vmem:[%s2 + $0x3b4] sm:$0xff]
  %v237 = vld [vmem:[%s2 + $0x3bc] sm:$0xf]
  %v238 = vld [vmem:[%s2 + $0x3c0] sm:$0xff]
  %v239 = vld [vmem:[%s2 + $0x3c8] sm:$0xf]
  %v240 = vld [vmem:[%s2 + $0x3cc] sm:$0xff]
  %v241 = vld [vmem:[%s2 + $0x3d4] sm:$0xf]
  %v242 = vld [vmem:[%s2 + $0x3d8] sm:$0xff]
  %v243 = vld [vmem:[%s2 + $0x3e0] sm:$0xf]
  %v244 = vld [vmem:[%s2 + $0x3e4] sm:$0xff]
  %v245 = vld [vmem:[%s2 + $0x3ec] sm:$0xf]
  %v246 = vld [vmem:[%s2 + $0x3f0] sm:$0xff]
  %v247 = vld [vmem:[%s2 + $0x3f8] sm:$0xf]
  %v248 = vld [vmem:[%s2 + $0x3fc] sm:$0xff]
  %v249 = vld [vmem:[%s2 + $0x404] sm:$0xf]
  %v250 = vld [vmem:[%s2 + $0x408] sm:$0xff]
  %v251 = vld [vmem:[%s2 + $0x410] sm:$0xf]
  %v252 = vld [vmem:[%s2 + $0x414] sm:$0xff]
  %v253 = vld [vmem:[%s2 + $0x41c] sm:$0xf]
  %v254 = vld [vmem:[%s2 + $0x420] sm:$0xff]
  %v255 = vld [vmem:[%s2 + $0x428] sm:$0xf]
  %v256 = vld [vmem:[%s2 + $0x42c] sm:$0xff]
  %v257 = vld [vmem:[%s2 + $0x434] sm:$0xf]
  %v258 = vld [vmem:[%s2 + $0x438] sm:$0xff]
  %v259 = vld [vmem:[%s2 + $0x440] sm:$0xf]
  %v260 = vld [vmem:[%s2 + $0x444] sm:$0xff]
  %v261 = vld [vmem:[%s2 + $0x44c] sm:$0xf]
  %v262 = vld [vmem:[%s2 + $0x450] sm:$0xff]
  %v263 = vld [vmem:[%s2 + $0x458] sm:$0xf]
  %v264 = vld [vmem:[%s2 + $0x45c] sm:$0xff]
  %v265 = vld [vmem:[%s2 + $0x464] sm:$0xf]
  %v266 = vld [vmem:[%s2 + $0x468] sm:$0xff]
  %v267 = vld [vmem:[%s2 + $0x470] sm:$0xf]
  %v268 = vld [vmem:[%s2 + $0x474] sm:$0xff]
  %v269 = vld [vmem:[%s2 + $0x47c] sm:$0xf]
  %v270 = vld [vmem:[%s2 + $0x480] sm:$0xff]
  %v271 = vld [vmem:[%s2 + $0x488] sm:$0xf]
  %v272 = vld [vmem:[%s2 + $0x48c] sm:$0xff]
  %v273 = vld [vmem:[%s2 + $0x494] sm:$0xf]
  %v274 = vld [vmem:[%s2 + $0x498] sm:$0xff]
  %v275 = vld [vmem:[%s2 + $0x4a0] sm:$0xf]
  %v276 = vld [vmem:[%s2 + $0x4a4] sm:$0xff]
  %v277 = vld [vmem:[%s2 + $0x4ac] sm:$0xf]
  %v278 = vld [vmem:[%s2 + $0x4b0] sm:$0xff]
  %v279 = vld [vmem:[%s2 + $0x4b8] sm:$0xf]
  %v280 = vld [vmem:[%s2 + $0x4bc] sm:$0xff]
  %v281 = vld [vmem:[%s2 + $0x4c4] sm:$0xf]
  %v282 = vld [vmem:[%s2 + $0x4c8] sm:$0xff]
  %v283 = vld [vmem:[%s2 + $0x4d0] sm:$0xf]
  %v284 = vld [vmem:[%s2 + $0x4d4] sm:$0xff]
  %v285 = vld [vmem:[%s2 + $0x4dc] sm:$0xf]
  %v286 = vld [vmem:[%s2 + $0x4e0] sm:$0xff]
  %v287 = vld [vmem:[%s2 + $0x4e8] sm:$0xf]
  %v288 = vld [vmem:[%s2 + $0x4ec] sm:$0xff]
  %v289 = vld [vmem:[%s2 + $0x4f4] sm:$0xf]
  %v290 = vld [vmem:[%s2 + $0x4f8] sm:$0xff]
  %v291 = vld [vmem:[%s2 + $0x500] sm:$0xf]
  %v292 = vld [vmem:[%s2 + $0x504] sm:$0xff]
  %v293 = vld [vmem:[%s2 + $0x50c] sm:$0xf]
  %v294 = vld [vmem:[%s2 + $0x510] sm:$0xff]
  %v295 = vld [vmem:[%s2 + $0x518] sm:$0xf]
  %v296 = vld [vmem:[%s2 + $0x51c] sm:$0xff]
  %v297 = vld [vmem:[%s2 + $0x524] sm:$0xf]
  %v298 = vld [vmem:[%s2 + $0x528] sm:$0xff]
  %v299 = vld [vmem:[%s2 + $0x530] sm:$0xf]
  %v300 = vld [vmem:[%s2 + $0x534] sm:$0xff]
  %v301 = vld [vmem:[%s2 + $0x53c] sm:$0xf]
  %v302 = vld [vmem:[%s2 + $0x540] sm:$0xff]
  %v303 = vld [vmem:[%s2 + $0x548] sm:$0xf]
  %v304 = vld [vmem:[%s2 + $0x54c] sm:$0xff]
  %v305 = vld [vmem:[%s2 + $0x554] sm:$0xf]
  %v306 = vld [vmem:[%s2 + $0x558] sm:$0xff]
  %v307 = vld [vmem:[%s2 + $0x560] sm:$0xf]
  %v308 = vld [vmem:[%s2 + $0x564] sm:$0xff]
  %v309 = vld [vmem:[%s2 + $0x56c] sm:$0xf]
  %v310 = vld [vmem:[%s2 + $0x570] sm:$0xff]
  %v311 = vld [vmem:[%s2 + $0x578] sm:$0xf]
  %v312 = vld [vmem:[%s2 + $0x57c] sm:$0xff]
  %v313 = vld [vmem:[%s2 + $0x584] sm:$0xf]
  %v314 = vld [vmem:[%s2 + $0x588] sm:$0xff]
  %v315 = vld [vmem:[%s2 + $0x590] sm:$0xf]
  %v316 = vld [vmem:[%s2 + $0x594] sm:$0xff]
  %v317 = vld [vmem:[%s2 + $0x59c] sm:$0xf]
  %v318 = vld [vmem:[%s2 + $0x5a0] sm:$0xff]
  %v319 = vld [vmem:[%s2 + $0x5a8] sm:$0xf]
  %v320 = vld [vmem:[%s2 + $0x5ac] sm:$0xff]
  %v321 = vld [vmem:[%s2 + $0x5b4] sm:$0xf]
  %v322 = vld [vmem:[%s2 + $0x5b8] sm:$0xff]
  %v323 = vld [vmem:[%s2 + $0x5c0] sm:$0xf]
  %v324 = vld [vmem:[%s2 + $0x5c4] sm:$0xff]
  %v325 = vld [vmem:[%s2 + $0x5cc] sm:$0xf]
  %v326 = vld [vmem:[%s2 + $0x5d0] sm:$0xff]
  %v327 = vld [vmem:[%s2 + $0x5d8] sm:$0xf]
  %v328 = vld [vmem:[%s2 + $0x5dc] sm:$0xff]
  %v329 = vld [vmem:[%s2 + $0x5e4] sm:$0xf]
  %v330 = vld [vmem:[%s2 + $0x5e8] sm:$0xff]
  %v331 = vld [vmem:[%s2 + $0x5f0] sm:$0xf]
  %v332 = vld [vmem:[%s2 + $0x5f4] sm:$0xff]
  %v333 = vld [vmem:[%s2 + $0x5fc] sm:$0xf]
  %v334 = vld [vmem:[%s2 + $0x600] sm:$0xff]
  %v335 = vld [vmem:[%s2 + $0x608] sm:$0xf]
  %v336 = vld [vmem:[%s2 + $0x60c] sm:$0xff]
  %v337 = vld [vmem:[%s2 + $0x614] sm:$0xf]
  %v338 = vld [vmem:[%s2 + $0x618] sm:$0xff]
  %v339 = vld [vmem:[%s2 + $0x620] sm:$0xf]
  %v340 = vld [vmem:[%s2 + $0x624] sm:$0xff]
  %v341 = vld [vmem:[%s2 + $0x62c] sm:$0xf]
  %v342 = vld [vmem:[%s2 + $0x630] sm:$0xff]
  %v343 = vld [vmem:[%s2 + $0x638] sm:$0xf]
  %v344 = vld [vmem:[%s2 + $0x63c] sm:$0xff]
  %v345 = vld [vmem:[%s2 + $0x644] sm:$0xf]
  %v346 = vld [vmem:[%s2 + $0x648] sm:$0xff]
  %v347 = vld [vmem:[%s2 + $0x650] sm:$0xf]
  %v348 = vld [vmem:[%s2 + $0x654] sm:$0xff]
  %v349 = vld [vmem:[%s2 + $0x65c] sm:$0xf]
  %v350 = vld [vmem:[%s2 + $0x660] sm:$0xff]
  %v351 = vld [vmem:[%s2 + $0x668] sm:$0xf]
  %v352 = vld [vmem:[%s2 + $0x66c] sm:$0xff]
  %v353 = vld [vmem:[%s2 + $0x674] sm:$0xf]
  %v354 = vld [vmem:[%s2 + $0x678] sm:$0xff]
  %v355 = vld [vmem:[%s2 + $0x680] sm:$0xf]
  %v356 = vld [vmem:[%s2 + $0x684] sm:$0xff]
  %v357 = vld [vmem:[%s2 + $0x68c] sm:$0xf]
  %v358 = vld [vmem:[%s2 + $0x690] sm:$0xff]
  %v359 = vld [vmem:[%s2 + $0x698] sm:$0xf]
  %v360 = vld [vmem:[%s2 + $0x69c] sm:$0xff]
  %v361 = vld [vmem:[%s2 + $0x6a4] sm:$0xf]
  %v362 = vld [vmem:[%s2 + $0x6a8] sm:$0xff]
  %v363 = vld [vmem:[%s2 + $0x6b0] sm:$0xf]
  %v364 = vld [vmem:[%s2 + $0x6b4] sm:$0xff]
  %v365 = vld [vmem:[%s2 + $0x6bc] sm:$0xf]
  %v366 = vld [vmem:[%s2 + $0x6c0] sm:$0xff]
  %v367 = vld [vmem:[%s2 + $0x6c8] sm:$0xf]
  %v368 = vld [vmem:[%s2 + $0x6cc] sm:$0xff]
  %v369 = vld [vmem:[%s2 + $0x6d4] sm:$0xf]
  %v370 = vld [vmem:[%s2 + $0x6d8] sm:$0xff]
  %v371 = vld [vmem:[%s2 + $0x6e0] sm:$0xf]
  %v372 = vld [vmem:[%s2 + $0x6e4] sm:$0xff]
  %v373 = vld [vmem:[%s2 + $0x6ec] sm:$0xf]
  %v374 = vld [vmem:[%s2 + $0x6f0] sm:$0xff]
  %v375 = vld [vmem:[%s2 + $0x6f8] sm:$0xf]
  %v376 = vld [vmem:[%s2 + $0x6fc] sm:$0xff]
  %v377 = vld [vmem:[%s2 + $0x704] sm:$0xf]
  %v378 = vld [vmem:[%s2 + $0x708] sm:$0xff]
  %v379 = vld [vmem:[%s2 + $0x710] sm:$0xf]
  %v380 = vld [vmem:[%s2 + $0x714] sm:$0xff]
  %v381 = vld [vmem:[%s2 + $0x71c] sm:$0xf]
  %v382 = vld [vmem:[%s2 + $0x720] sm:$0xff]
  %v383 = vld [vmem:[%s2 + $0x728] sm:$0xf]
  %v384 = vld [vmem:[%s2 + $0x72c] sm:$0xff]
  %v385 = vld [vmem:[%s2 + $0x734] sm:$0xf]
  %v386 = vld [vmem:[%s2 + $0x738] sm:$0xff]
  %v387 = vld [vmem:[%s2 + $0x740] sm:$0xf]
  %v388 = vld [vmem:[%s2 + $0x744] sm:$0xff]
  %v389 = vld [vmem:[%s2 + $0x74c] sm:$0xf]
  %v390 = vld [vmem:[%s2 + $0x750] sm:$0xff]
  %v391 = vld [vmem:[%s2 + $0x758] sm:$0xf]
  %v392 = vld [vmem:[%s2 + $0x75c] sm:$0xff]
  %v393 = vld [vmem:[%s2 + $0x764] sm:$0xf]
  %v394 = vld [vmem:[%s2 + $0x768] sm:$0xff]
  %v395 = vld [vmem:[%s2 + $0x770] sm:$0xf]
  %v396 = vld [vmem:[%s2 + $0x774] sm:$0xff]
  %v397 = vld [vmem:[%s2 + $0x77c] sm:$0xf]
  %v398 = vld [vmem:[%s2 + $0x780] sm:$0xff]
  %v399 = vld [vmem:[%s2 + $0x788] sm:$0xf]
  %v400 = vld [vmem:[%s2 + $0x78c] sm:$0xff]
  %v401 = vld [vmem:[%s2 + $0x794] sm:$0xf]
  %v402 = vld [vmem:[%s2 + $0x798] sm:$0xff]
  %v403 = vld [vmem:[%s2 + $0x7a0] sm:$0xf]
  %v404 = vld [vmem:[%s2 + $0x7a4] sm:$0xff]
  %v405 = vld [vmem:[%s2 + $0x7ac] sm:$0xf]
  %v406 = vld [vmem:[%s2 + $0x7b0] sm:$0xff]
  %v407 = vld [vmem:[%s2 + $0x7b8] sm:$0xf]
  %v408 = vld [vmem:[%s2 + $0x7bc] sm:$0xff]
  %v409 = vld [vmem:[%s2 + $0x7c4] sm:$0xf]
  %v410 = vld [vmem:[%s2 + $0x7c8] sm:$0xff]
  %v411 = vld [vmem:[%s2 + $0x7d0] sm:$0xf]
  %v412 = vld [vmem:[%s2 + $0x7d4] sm:$0xff]
  %v413 = vld [vmem:[%s2 + $0x7dc] sm:$0xf]
  %v414 = vld [vmem:[%s2 + $0x7e0] sm:$0xff]
  %v415 = vld [vmem:[%s2 + $0x7e8] sm:$0xf]
  %v416 = vld [vmem:[%s2 + $0x7ec] sm:$0xff]
  %v417 = vld [vmem:[%s2 + $0x7f4] sm:$0xf]
  %v418 = vld [vmem:[%s2 + $0x7f8] sm:$0xff]
  %v419 = vld [vmem:[%s2 + $0x800] sm:$0xf]
  %v420 = vld [vmem:[%s2 + $0x804] sm:$0xff]
  %v421 = vld [vmem:[%s2 + $0x80c] sm:$0xf]
  %v422 = vld [vmem:[%s2 + $0x810] sm:$0xff]
  %v423 = vld [vmem:[%s2 + $0x818] sm:$0xf]
  %v424 = vld [vmem:[%s2 + $0x81c] sm:$0xff]
  %v425 = vld [vmem:[%s2 + $0x824] sm:$0xf]
  %v426 = vld [vmem:[%s2 + $0x828] sm:$0xff]
  %v427 = vld [vmem:[%s2 + $0x830] sm:$0xf]
  %v428 = vld [vmem:[%s2 + $0x834] sm:$0xff]
  %v429 = vld [vmem:[%s2 + $0x83c] sm:$0xf]
  %v430 = vld [vmem:[%s2 + $0x840] sm:$0xff]
  %v431 = vld [vmem:[%s2 + $0x848] sm:$0xf]
  %v432 = vld [vmem:[%s2 + $0x84c] sm:$0xff]
  %v433 = vld [vmem:[%s2 + $0x854] sm:$0xf]
  %v434 = vld [vmem:[%s2 + $0x858] sm:$0xff]
  %v435 = vld [vmem:[%s2 + $0x860] sm:$0xf]
  %v436 = vld [vmem:[%s2 + $0x864] sm:$0xff]
  %v437 = vld [vmem:[%s2 + $0x86c] sm:$0xf]
  %v438 = vld [vmem:[%s2 + $0x870] sm:$0xff]
  %v439 = vld [vmem:[%s2 + $0x878] sm:$0xf]
  %v440 = vld [vmem:[%s2 + $0x87c] sm:$0xff]
  %v441 = vld [vmem:[%s2 + $0x884] sm:$0xf]
  %v442 = vld [vmem:[%s2 + $0x888] sm:$0xff]
  %v443 = vld [vmem:[%s2 + $0x890] sm:$0xf]
  %v444 = vld [vmem:[%s2 + $0x894] sm:$0xff]
  %v445 = vld [vmem:[%s2 + $0x89c] sm:$0xf]
  %v446 = vld [vmem:[%s2 + $0x8a0] sm:$0xff]
  %v447 = vld [vmem:[%s2 + $0x8a8] sm:$0xf]
  %v448 = vld [vmem:[%s2 + $0x8ac] sm:$0xff]
  %v449 = vld [vmem:[%s2 + $0x8b4] sm:$0xf]
  %v450 = vld [vmem:[%s2 + $0x8b8] sm:$0xff]
  %v451 = vld [vmem:[%s2 + $0x8c0] sm:$0xf]
  %v452 = vld [vmem:[%s2 + $0x8c4] sm:$0xff]
  %v453 = vld [vmem:[%s2 + $0x8cc] sm:$0xf]
  %v454 = vld [vmem:[%s2 + $0x8d0] sm:$0xff]
  %v455 = vld [vmem:[%s2 + $0x8d8] sm:$0xf]
  %v456 = vld [vmem:[%s2 + $0x8dc] sm:$0xff]
  %v457 = vld [vmem:[%s2 + $0x8e4] sm:$0xf]
  %v458 = vld [vmem:[%s2 + $0x8e8] sm:$0xff]
  %v459 = vld [vmem:[%s2 + $0x8f0] sm:$0xf]
  %v460 = vld [vmem:[%s2 + $0x8f4] sm:$0xff]
  %v461 = vld [vmem:[%s2 + $0x8fc] sm:$0xf]
  %v462 = vld [vmem:[%s2 + $0x900] sm:$0xff]
  %v463 = vld [vmem:[%s2 + $0x908] sm:$0xf]
  %v464 = vld [vmem:[%s2 + $0x90c] sm:$0xff]
  %v465 = vld [vmem:[%s2 + $0x914] sm:$0xf]
  %v466 = vld [vmem:[%s2 + $0x918] sm:$0xff]
  %v467 = vld [vmem:[%s2 + $0x920] sm:$0xf]
  %v468 = vld [vmem:[%s2 + $0x924] sm:$0xff]
  %v469 = vld [vmem:[%s2 + $0x92c] sm:$0xf]
  %v470 = vld [vmem:[%s2 + $0x930] sm:$0xff]
  %v471 = vld [vmem:[%s2 + $0x938] sm:$0xf]
  %v472 = vld [vmem:[%s2 + $0x93c] sm:$0xff]
  %v473 = vld [vmem:[%s2 + $0x944] sm:$0xf]
  %v474 = vld [vmem:[%s2 + $0x948] sm:$0xff]
  %v475 = vld [vmem:[%s2 + $0x950] sm:$0xf]
  %v476 = vld [vmem:[%s2 + $0x954] sm:$0xff]
  %v477 = vld [vmem:[%s2 + $0x95c] sm:$0xf]
  %v478 = vld [vmem:[%s2 + $0x960] sm:$0xff]
  %v479 = vld [vmem:[%s2 + $0x968] sm:$0xf]
  %v480 = vld [vmem:[%s2 + $0x96c] sm:$0xff]
  %v481 = vld [vmem:[%s2 + $0x974] sm:$0xf]
  %v482 = vld [vmem:[%s2 + $0x978] sm:$0xff]
  %v483 = vld [vmem:[%s2 + $0x980] sm:$0xf]
  %v484 = vld [vmem:[%s2 + $0x984] sm:$0xff]
  %v485 = vld [vmem:[%s2 + $0x98c] sm:$0xf]
  %v486 = vld [vmem:[%s2 + $0x990] sm:$0xff]
  %v487 = vld [vmem:[%s2 + $0x998] sm:$0xf]
  %v488 = vld [vmem:[%s2 + $0x99c] sm:$0xff]
  %v489 = vld [vmem:[%s2 + $0x9a4] sm:$0xf]
  %v490 = vld [vmem:[%s2 + $0x9a8] sm:$0xff]
  %v491 = vld [vmem:[%s2 + $0x9b0] sm:$0xf]
  %v492 = vld [vmem:[%s2 + $0x9b4] sm:$0xff]
  %v493 = vld [vmem:[%s2 + $0x9bc] sm:$0xf]
  %v494 = vld [vmem:[%s2 + $0x9c0] sm:$0xff]
  %v495 = vld [vmem:[%s2 + $0x9c8] sm:$0xf]
  %v496 = vld [vmem:[%s2 + $0x9cc] sm:$0xff]
  %v497 = vld [vmem:[%s2 + $0x9d4] sm:$0xf]
  %v498 = vld [vmem:[%s2 + $0x9d8] sm:$0xff]
  %v499 = vld [vmem:[%s2 + $0x9e0] sm:$0xf]
  %v500 = vld [vmem:[%s2 + $0x9e4] sm:$0xff]
  %v501 = vld [vmem:[%s2 + $0x9ec] sm:$0xf]
  %v502 = vld [vmem:[%s2 + $0x9f0] sm:$0xff]
  %v503 = vld [vmem:[%s2 + $0x9f8] sm:$0xf]
  %v504 = vld [vmem:[%s2 + $0x9fc] sm:$0xff]
  %v505 = vld [vmem:[%s2 + $0xa04] sm:$0xf]
  %v506 = vld [vmem:[%s2 + $0xa08] sm:$0xff]
  %v507 = vld [vmem:[%s2 + $0xa10] sm:$0xf]
  %v508 = vld [vmem:[%s2 + $0xa14] sm:$0xff]
  %v509 = vld [vmem:[%s2 + $0xa1c] sm:$0xf]
  %v510 = vld [vmem:[%s2 + $0xa20] sm:$0xff]
  %v511 = vld [vmem:[%s2 + $0xa28] sm:$0xf]
  %v512 = vld [vmem:[%s2 + $0xa2c] sm:$0xff]
  %v513 = vld [vmem:[%s2 + $0xa34] sm:$0xf]
  %v514 = vld [vmem:[%s2 + $0xa38] sm:$0xff]
  %v515 = vld [vmem:[%s2 + $0xa40] sm:$0xf]
  %v516 = vld [vmem:[%s2 + $0xa44] sm:$0xff]
  %v517 = vld [vmem:[%s2 + $0xa4c] sm:$0xf]
  %v518 = vld [vmem:[%s2 + $0xa50] sm:$0xff]
  %v519 = vld [vmem:[%s2 + $0xa58] sm:$0xf]
  %v520 = vld [vmem:[%s2 + $0xa5c] sm:$0xff]
  %v521 = vld [vmem:[%s2 + $0xa64] sm:$0xf]
  %v522 = vld [vmem:[%s2 + $0xa68] sm:$0xff]
  %v523 = vld [vmem:[%s2 + $0xa70] sm:$0xf]
  %v524 = vld [vmem:[%s2 + $0xa74] sm:$0xff]
  %v525 = vld [vmem:[%s2 + $0xa7c] sm:$0xf]
  %v526 = vld [vmem:[%s2 + $0xa80] sm:$0xff]
  %v527 = vld [vmem:[%s2 + $0xa88] sm:$0xf]
  %v528 = vld [vmem:[%s2 + $0xa8c] sm:$0xff]
  %v529 = vld [vmem:[%s2 + $0xa94] sm:$0xf]
  %v530 = vld [vmem:[%s2 + $0xa98] sm:$0xff]
  %v531 = vld [vmem:[%s2 + $0xaa0] sm:$0xf]
  %v532 = vld [vmem:[%s2 + $0xaa4] sm:$0xff]
  %v533 = vld [vmem:[%s2 + $0xaac] sm:$0xf]
  %v534 = vld [vmem:[%s2 + $0xab0] sm:$0xff]
  %v535 = vld [vmem:[%s2 + $0xab8] sm:$0xf]
  %v536 = vld [vmem:[%s2 + $0xabc] sm:$0xff]
  %v537 = vld [vmem:[%s2 + $0xac4] sm:$0xf]
  %v538 = vld [vmem:[%s2 + $0xac8] sm:$0xff]
  %v539 = vld [vmem:[%s2 + $0xad0] sm:$0xf]
  %v540 = vld [vmem:[%s2 + $0xad4] sm:$0xff]
  %v541 = vld [vmem:[%s2 + $0xadc] sm:$0xf]
  %v542 = vld [vmem:[%s2 + $0xae0] sm:$0xff]
  %v543 = vld [vmem:[%s2 + $0xae8] sm:$0xf]
  %v544 = vld [vmem:[%s2 + $0xaec] sm:$0xff]
  %v545 = vld [vmem:[%s2 + $0xaf4] sm:$0xf]
  %v546 = vld [vmem:[%s2 + $0xaf8] sm:$0xff]
  %v547 = vld [vmem:[%s2 + $0xb00] sm:$0xf]
  %v548 = vld [vmem:[%s2 + $0xb04] sm:$0xff]
  %v549 = vld [vmem:[%s2 + $0xb0c] sm:$0xf]
  %v550 = vld [vmem:[%s2 + $0xb10] sm:$0xff]
  %v551 = vld [vmem:[%s2 + $0xb18] sm:$0xf]
  %v552 = vld [vmem:[%s2 + $0xb1c] sm:$0xff]
  %v553 = vld [vmem:[%s2 + $0xb24] sm:$0xf]
  %v554 = vld [vmem:[%s2 + $0xb28] sm:$0xff]
  %v555 = vld [vmem:[%s2 + $0xb30] sm:$0xf]
  %v556 = vld [vmem:[%s2 + $0xb34] sm:$0xff]
  %v557 = vld [vmem:[%s2 + $0xb3c] sm:$0xf]
  %v558 = vld [vmem:[%s2 + $0xb40] sm:$0xff]
  %v559 = vld [vmem:[%s2 + $0xb48] sm:$0xf]
  %v560 = vld [vmem:[%s2 + $0xb4c] sm:$0xff]
  %v561 = vld [vmem:[%s2 + $0xb54] sm:$0xf]
  %v562 = vld [vmem:[%s2 + $0xb58] sm:$0xff]
  %v563 = vld [vmem:[%s2 + $0xb60] sm:$0xf]
  %v564 = vld [vmem:[%s2 + $0xb64] sm:$0xff]
  %v565 = vld [vmem:[%s2 + $0xb6c] sm:$0xf]
  %v566 = vld [vmem:[%s2 + $0xb70] sm:$0xff]
  %v567 = vld [vmem:[%s2 + $0xb78] sm:$0xf]
  %v568 = vld [vmem:[%s2 + $0xb7c] sm:$0xff]
  %v569 = vld [vmem:[%s2 + $0xb84] sm:$0xf]
  %v570 = vld [vmem:[%s2 + $0xb88] sm:$0xff]
  %v571 = vld [vmem:[%s2 + $0xb90] sm:$0xf]
  %v572 = vld [vmem:[%s2 + $0xb94] sm:$0xff]
  %v573 = vld [vmem:[%s2 + $0xb9c] sm:$0xf]
  %v574 = vld [vmem:[%s2 + $0xba0] sm:$0xff]
  %v575 = vld [vmem:[%s2 + $0xba8] sm:$0xf]
  %v576 = vld [vmem:[%s2 + $0xbac] sm:$0xff]
  %v577 = vld [vmem:[%s2 + $0xbb4] sm:$0xf]
  %v578 = vld [vmem:[%s2 + $0xbb8] sm:$0xff]
  %v579 = vld [vmem:[%s2 + $0xbc0] sm:$0xf]
  %v580 = vld [vmem:[%s2 + $0xbc4] sm:$0xff]
  %v581 = vld [vmem:[%s2 + $0xbcc] sm:$0xf]
  %v582 = vld [vmem:[%s2 + $0xbd0] sm:$0xff]
  %v583 = vld [vmem:[%s2 + $0xbd8] sm:$0xf]
  %v584 = vld [vmem:[%s2 + $0xbdc] sm:$0xff]
  %v585 = vld [vmem:[%s2 + $0xbe4] sm:$0xf]
  %v586 = vld [vmem:[%s2 + $0xbe8] sm:$0xff]
  %v587 = vld [vmem:[%s2 + $0xbf0] sm:$0xf]
  %v588 = vld [vmem:[%s2 + $0xbf4] sm:$0xff]
  %v589 = vld [vmem:[%s2 + $0xbfc] sm:$0xf]
  %v590 = vld [vmem:[%s2 + $0xc00] sm:$0xff]
  %v591 = vld [vmem:[%s2 + $0xc08] sm:$0xf]
  %v592 = vld [vmem:[%s2 + $0xc0c] sm:$0xff]
  %v593 = vld [vmem:[%s2 + $0xc14] sm:$0xf]
  %v594 = vld [vmem:[%s2 + $0xc18] sm:$0xff]
  %v595 = vld [vmem:[%s2 + $0xc20] sm:$0xf]
  %v596 = vld [vmem:[%s2 + $0xc24] sm:$0xff]
  %v597 = vld [vmem:[%s2 + $0xc2c] sm:$0xf]
  %v598 = vld [vmem:[%s2 + $0xc30] sm:$0xff]
  %v599 = vld [vmem:[%s2 + $0xc38] sm:$0xf]
  %v600 = vld [vmem:[%s2 + $0xc3c] sm:$0xff]
  %v601 = vld [vmem:[%s2 + $0xc44] sm:$0xf]
  %v602 = vld [vmem:[%s2 + $0xc48] sm:$0xff]
  %v603 = vld [vmem:[%s2 + $0xc50] sm:$0xf]
  %v604 = vld [vmem:[%s2 + $0xc54] sm:$0xff]
  %v605 = vld [vmem:[%s2 + $0xc5c] sm:$0xf]
  %v606 = vld [vmem:[%s2 + $0xc60] sm:$0xff]
  %v607 = vld [vmem:[%s2 + $0xc68] sm:$0xf]
  %v608 = vld [vmem:[%s2 + $0xc6c] sm:$0xff]
  %v609 = vld [vmem:[%s2 + $0xc74] sm:$0xf]
  %v610 = vld [vmem:[%s2 + $0xc78] sm:$0xff]
  %v611 = vld [vmem:[%s2 + $0xc80] sm:$0xf]
  %v612 = vld [vmem:[%s2 + $0xc84] sm:$0xff]
  %v613 = vld [vmem:[%s2 + $0xc8c] sm:$0xf]
  %v614 = vld [vmem:[%s2 + $0xc90] sm:$0xff]
  %v615 = vld [vmem:[%s2 + $0xc98] sm:$0xf]
  %v616 = vld [vmem:[%s2 + $0xc9c] sm:$0xff]
  %v617 = vld [vmem:[%s2 + $0xca4] sm:$0xf]
  %v618 = vld [vmem:[%s2 + $0xca8] sm:$0xff]
  %v619 = vld [vmem:[%s2 + $0xcb0] sm:$0xf]
  %v620 = vld [vmem:[%s2 + $0xcb4] sm:$0xff]
  %v621 = vld [vmem:[%s2 + $0xcbc] sm:$0xf]
  %v622 = vld [vmem:[%s2 + $0xcc0] sm:$0xff]
  %v623 = vld [vmem:[%s2 + $0xcc8] sm:$0xf]
  %v624 = vld [vmem:[%s2 + $0xccc] sm:$0xff]
  %v625 = vld [vmem:[%s2 + $0xcd4] sm:$0xf]
  %v626 = vld [vmem:[%s2 + $0xcd8] sm:$0xff]
  %v627 = vld [vmem:[%s2 + $0xce0] sm:$0xf]
  %v628 = vld [vmem:[%s2 + $0xce4] sm:$0xff]
  %v629 = vld [vmem:[%s2 + $0xcec] sm:$0xf]
  %v630 = vld [vmem:[%s2 + $0xcf0] sm:$0xff]
  %v631 = vld [vmem:[%s2 + $0xcf8] sm:$0xf]
  %v632 = vld [vmem:[%s2 + $0xcfc] sm:$0xff]
  %v633 = vld [vmem:[%s2 + $0xd04] sm:$0xf]
  %v634 = vld [vmem:[%s2 + $0xd08] sm:$0xff]
  %v635 = vld [vmem:[%s2 + $0xd10] sm:$0xf]
  %v636 = vld [vmem:[%s2 + $0xd14] sm:$0xff]
  %v637 = vld [vmem:[%s2 + $0xd1c] sm:$0xf]
  %v638 = vld [vmem:[%s2 + $0xd20] sm:$0xff]
  %v639 = vld [vmem:[%s2 + $0xd28] sm:$0xf]
  %v640 = vld [vmem:[%s2 + $0xd2c] sm:$0xff]
  %v641 = vld [vmem:[%s2 + $0xd34] sm:$0xf]
  %v642 = vld [vmem:[%s2 + $0xd38] sm:$0xff]
  %v643 = vld [vmem:[%s2 + $0xd40] sm:$0xf]
  %v644 = vld [vmem:[%s2 + $0xd44] sm:$0xff]
  %v645 = vld [vmem:[%s2 + $0xd4c] sm:$0xf]
  %v646 = vld [vmem:[%s2 + $0xd50] sm:$0xff]
  %v647 = vld [vmem:[%s2 + $0xd58] sm:$0xf]
  %v648 = vld [vmem:[%s2 + $0xd5c] sm:$0xff]
  %v649 = vld [vmem:[%s2 + $0xd64] sm:$0xf]
  %v650 = vld [vmem:[%s2 + $0xd68] sm:$0xff]
  %v651 = vld [vmem:[%s2 + $0xd70] sm:$0xf]
  %v652 = vld [vmem:[%s2 + $0xd74] sm:$0xff]
  %v653 = vld [vmem:[%s2 + $0xd7c] sm:$0xf]
  %v654 = vld [vmem:[%s2 + $0xd80] sm:$0xff]
  %v655 = vld [vmem:[%s2 + $0xd88] sm:$0xf]
  %v656 = vld [vmem:[%s2 + $0xd8c] sm:$0xff]
  %v657 = vld [vmem:[%s2 + $0xd94] sm:$0xf]
  %v658 = vld [vmem:[%s2 + $0xd98] sm:$0xff]
  %v659 = vld [vmem:[%s2 + $0xda0] sm:$0xf]
  %v660 = vld [vmem:[%s2 + $0xda4] sm:$0xff]
  %v661 = vld [vmem:[%s2 + $0xdac] sm:$0xf]
  %v662 = vld [vmem:[%s2 + $0xdb0] sm:$0xff]
  %v663 = vld [vmem:[%s2 + $0xdb8] sm:$0xf]
  %v664 = vld [vmem:[%s2 + $0xdbc] sm:$0xff]
  %v665 = vld [vmem:[%s2 + $0xdc4] sm:$0xf]
  %v666 = vld [vmem:[%s2 + $0xdc8] sm:$0xff]
  %v667 = vld [vmem:[%s2 + $0xdd0] sm:$0xf]
  %v668 = vld [vmem:[%s2 + $0xdd4] sm:$0xff]
  %v669 = vld [vmem:[%s2 + $0xddc] sm:$0xf]
  %v670 = vld [vmem:[%s2 + $0xde0] sm:$0xff]
  %v671 = vld [vmem:[%s2 + $0xde8] sm:$0xf]
  %v672 = vld [vmem:[%s2 + $0xdec] sm:$0xff]
  %v673 = vld [vmem:[%s2 + $0xdf4] sm:$0xf]
  %v674 = vld [vmem:[%s2 + $0xdf8] sm:$0xff]
  %v675 = vld [vmem:[%s2 + $0xe00] sm:$0xf]
  %v676 = vld [vmem:[%s2 + $0xe04] sm:$0xff]
  %v677 = vld [vmem:[%s2 + $0xe0c] sm:$0xf]
  %v678 = vld [vmem:[%s2 + $0xe10] sm:$0xff]
  %v679 = vld [vmem:[%s2 + $0xe18] sm:$0xf]
  %v680 = vld [vmem:[%s2 + $0xe1c] sm:$0xff]
  %v681 = vld [vmem:[%s2 + $0xe24] sm:$0xf]
  %v682 = vld [vmem:[%s2 + $0xe28] sm:$0xff]
  %v683 = vld [vmem:[%s2 + $0xe30] sm:$0xf]
  %v684 = vld [vmem:[%s2 + $0xe34] sm:$0xff]
  %v685 = vld [vmem:[%s2 + $0xe3c] sm:$0xf]
  %v686 = vld [vmem:[%s2 + $0xe40] sm:$0xff]
  %v687 = vld [vmem:[%s2 + $0xe48] sm:$0xf]
  %v688 = vld [vmem:[%s2 + $0xe4c] sm:$0xff]
  %v689 = vld [vmem:[%s2 + $0xe54] sm:$0xf]
  %v690 = vld [vmem:[%s2 + $0xe58] sm:$0xff]
  %v691 = vld [vmem:[%s2 + $0xe60] sm:$0xf]
  %v692 = vld [vmem:[%s2 + $0xe64] sm:$0xff]
  %v693 = vld [vmem:[%s2 + $0xe6c] sm:$0xf]
  %v694 = vld [vmem:[%s2 + $0xe70] sm:$0xff]
  %v695 = vld [vmem:[%s2 + $0xe78] sm:$0xf]
  %v696 = vld [vmem:[%s2 + $0xe7c] sm:$0xff]
  %v697 = vld [vmem:[%s2 + $0xe84] sm:$0xf]
  %v698 = vld [vmem:[%s2 + $0xe88] sm:$0xff]
  %v699 = vld [vmem:[%s2 + $0xe90] sm:$0xf]
  %v700 = vld [vmem:[%s2 + $0xe94] sm:$0xff]
  %v701 = vld [vmem:[%s2 + $0xe9c] sm:$0xf]
  %v702 = vld [vmem:[%s2 + $0xea0] sm:$0xff]
  %v703 = vld [vmem:[%s2 + $0xea8] sm:$0xf]
  %v704 = vld [vmem:[%s2 + $0xeac] sm:$0xff]
  %v705 = vld [vmem:[%s2 + $0xeb4] sm:$0xf]
  %v706 = vld [vmem:[%s2 + $0xeb8] sm:$0xff]
  %v707 = vld [vmem:[%s2 + $0xec0] sm:$0xf]
  %v708 = vld [vmem:[%s2 + $0xec4] sm:$0xff]
  %v709 = vld [vmem:[%s2 + $0xecc] sm:$0xf]
  %v710 = vld [vmem:[%s2 + $0xed0] sm:$0xff]
  %v711 = vld [vmem:[%s2 + $0xed8] sm:$0xf]
  %v712 = vld [vmem:[%s2 + $0xedc] sm:$0xff]
  %v713 = vld [vmem:[%s2 + $0xee4] sm:$0xf]
  %v714 = vld [vmem:[%s2 + $0xee8] sm:$0xff]
  %v715 = vld [vmem:[%s2 + $0xef0] sm:$0xf]
  %v716 = vld [vmem:[%s2 + $0xef4] sm:$0xff]
  %v717 = vld [vmem:[%s2 + $0xefc] sm:$0xf]
  %v718 = vld [vmem:[%s2 + $0xf00] sm:$0xff]
  %v719 = vld [vmem:[%s2 + $0xf08] sm:$0xf]
  %v720 = vld [vmem:[%s2 + $0xf0c] sm:$0xff]
  %v721 = vld [vmem:[%s2 + $0xf14] sm:$0xf]
  %v722 = vld [vmem:[%s2 + $0xf18] sm:$0xff]
  %v723 = vld [vmem:[%s2 + $0xf20] sm:$0xf]
  %v724 = vld [vmem:[%s2 + $0xf24] sm:$0xff]
  %v725 = vld [vmem:[%s2 + $0xf2c] sm:$0xf]
  %v726 = vld [vmem:[%s2 + $0xf30] sm:$0xff]
  %v727 = vld [vmem:[%s2 + $0xf38] sm:$0xf]
  %v728 = vld [vmem:[%s2 + $0xf3c] sm:$0xff]
  %v729 = vld [vmem:[%s2 + $0xf44] sm:$0xf]
  %v730 = vld [vmem:[%s2 + $0xf48] sm:$0xff]
  %v731 = vld [vmem:[%s2 + $0xf50] sm:$0xf]
  %v732 = vld [vmem:[%s2 + $0xf54] sm:$0xff]
  %v733 = vld [vmem:[%s2 + $0xf5c] sm:$0xf]
  %v734 = vld [vmem:[%s2 + $0xf60] sm:$0xff]
  %v735 = vld [vmem:[%s2 + $0xf68] sm:$0xf]
  %v736 = vld [vmem:[%s2 + $0xf6c] sm:$0xff]
  %v737 = vld [vmem:[%s2 + $0xf74] sm:$0xf]
  %v738 = vld [vmem:[%s2 + $0xf78] sm:$0xff]
  %v739 = vld [vmem:[%s2 + $0xf80] sm:$0xf]
  %v740 = vld [vmem:[%s2 + $0xf84] sm:$0xff]
  %v741 = vld [vmem:[%s2 + $0xf8c] sm:$0xf]
  %v742 = vld [vmem:[%s2 + $0xf90] sm:$0xff]
  %v743 = vld [vmem:[%s2 + $0xf98] sm:$0xf]
  %v744 = vld [vmem:[%s2 + $0xf9c] sm:$0xff]
  %v745 = vld [vmem:[%s2 + $0xfa4] sm:$0xf]
  %v746 = vld [vmem:[%s2 + $0xfa8] sm:$0xff]
  %v747 = vld [vmem:[%s2 + $0xfb0] sm:$0xf]
  %v748 = vld [vmem:[%s2 + $0xfb4] sm:$0xff]
  %v749 = vld [vmem:[%s2 + $0xfbc] sm:$0xf]
  %v750 = vld [vmem:[%s2 + $0xfc0] sm:$0xff]
  %v751 = vld [vmem:[%s2 + $0xfc8] sm:$0xf]
  %v752 = vld [vmem:[%s2 + $0xfcc] sm:$0xff]
  %v753 = vld [vmem:[%s2 + $0xfd4] sm:$0xf]
  %v754 = vld [vmem:[%s2 + $0xfd8] sm:$0xff]
  %v755 = vld [vmem:[%s2 + $0xfe0] sm:$0xf]
  %v756 = vld [vmem:[%s2 + $0xfe4] sm:$0xff]
  %v757 = vld [vmem:[%s2 + $0xfec] sm:$0xf]
  %v758 = vld [vmem:[%s2 + $0xff0] sm:$0xff]
  %v759 = vld [vmem:[%s2 + $0xff8] sm:$0xf]
  %v760 = vld [vmem:[%s2 + $0xffc] sm:$0xff]
  %v761 = vld [vmem:[%s2 + $0x1004] sm:$0xf]
  %v762 = vld [vmem:[%s2 + $0x1008] sm:$0xff]
  %v763 = vld [vmem:[%s2 + $0x1010] sm:$0xf]
  %v764 = vld [vmem:[%s2 + $0x1014] sm:$0xff]
  %v765 = vld [vmem:[%s2 + $0x101c] sm:$0xf]
  %v766 = vld [vmem:[%s2 + $0x1020] sm:$0xff]
  %v767 = vld [vmem:[%s2 + $0x1028] sm:$0xf]
  %v768 = vld [vmem:[%s2 + $0x102c] sm:$0xff]
  %v769 = vld [vmem:[%s2 + $0x1034] sm:$0xf]
  %v770 = vld [vmem:[%s2 + $0x1038] sm:$0xff]
  %v771 = vld [vmem:[%s2 + $0x1040] sm:$0xf]
  %v772 = vld [vmem:[%s2 + $0x1044] sm:$0xff]
  %v773 = vld [vmem:[%s2 + $0x104c] sm:$0xf]
  %v774 = vld [vmem:[%s2 + $0x1050] sm:$0xff]
  %v775 = vld [vmem:[%s2 + $0x1058] sm:$0xf]
  %v776 = vld [vmem:[%s2 + $0x105c] sm:$0xff]
  %v777 = vld [vmem:[%s2 + $0x1064] sm:$0xf]
  %v778 = vld [vmem:[%s2 + $0x1068] sm:$0xff]
  %v779 = vld [vmem:[%s2 + $0x1070] sm:$0xf]
  %v780 = vld [vmem:[%s2 + $0x1074] sm:$0xff]
  %v781 = vld [vmem:[%s2 + $0x107c] sm:$0xf]
  %v782 = vld [vmem:[%s2 + $0x1080] sm:$0xff]
  %v783 = vld [vmem:[%s2 + $0x1088] sm:$0xf]
  %v784 = vld [vmem:[%s2 + $0x108c] sm:$0xff]
  %v785 = vld [vmem:[%s2 + $0x1094] sm:$0xf]
  %v786 = vld [vmem:[%s2 + $0x1098] sm:$0xff]
  %v787 = vld [vmem:[%s2 + $0x10a0] sm:$0xf]
  %v788 = vld [vmem:[%s2 + $0x10a4] sm:$0xff]
  %v789 = vld [vmem:[%s2 + $0x10ac] sm:$0xf]
  %v790 = vld [vmem:[%s2 + $0x10b0] sm:$0xff]
  %v791 = vld [vmem:[%s2 + $0x10b8] sm:$0xf]
  %v792 = vld [vmem:[%s2 + $0x10bc] sm:$0xff]
  %v793 = vld [vmem:[%s2 + $0x10c4] sm:$0xf]
  %v794 = vld [vmem:[%s2 + $0x10c8] sm:$0xff]
  %v795 = vld [vmem:[%s2 + $0x10d0] sm:$0xf]
  %v796 = vld [vmem:[%s2 + $0x10d4] sm:$0xff]
  %v797 = vld [vmem:[%s2 + $0x10dc] sm:$0xf]
  %v846 = vunpack.c.l.b16 %v30
  %v847 = vunpack.c.h.b16 %v30
  %v848 = vunpack.c.l.b16 %v31
  %v849 = vunpack.c.h.b16 %v31
  %v850 = vunpack.c.l.b16 %v32
  %v851 = vunpack.c.h.b16 %v32
  %v852 = vunpack.c.l.b16 %v33
  %v853 = vunpack.c.h.b16 %v33
  %v854 = vunpack.c.l.b16 %v34
  %v855 = vunpack.c.h.b16 %v34
  %v856 = vunpack.c.l.b16 %v35
  %v857 = vunpack.c.h.b16 %v35
  %v858 = vunpack.c.l.b16 %v36
  %v859 = vunpack.c.h.b16 %v36
  %v860 = vunpack.c.l.b16 %v37
  %v861 = vunpack.c.h.b16 %v37
  %v862 = vunpack.c.l.b16 %v38
  %v863 = vunpack.c.h.b16 %v38
  %v864 = vunpack.c.l.b16 %v39
  %v865 = vunpack.c.h.b16 %v39
  %v866 = vunpack.c.l.b16 %v40
  %v867 = vunpack.c.h.b16 %v40
  %v868 = vunpack.c.l.b16 %v41
  %v869 = vunpack.c.l.b16 %v42
  %v870 = vunpack.c.h.b16 %v42
  %v871 = vunpack.c.l.b16 %v43
  %v872 = vunpack.c.h.b16 %v43
  %v873 = vunpack.c.l.b16 %v44
  %v874 = vunpack.c.h.b16 %v44
  %v875 = vunpack.c.l.b16 %v45
  %v876 = vunpack.c.h.b16 %v45
  %v877 = vunpack.c.l.b16 %v46
  %v878 = vunpack.c.h.b16 %v46
  %v879 = vunpack.c.l.b16 %v47
  %v880 = vunpack.c.h.b16 %v47
  %v881 = vunpack.c.l.b16 %v48
  %v882 = vunpack.c.h.b16 %v48
  %v883 = vunpack.c.l.b16 %v49
  %v884 = vunpack.c.h.b16 %v49
  %v885 = vunpack.c.l.b16 %v50
  %v886 = vunpack.c.h.b16 %v50
  %v887 = vunpack.c.l.b16 %v51
  %v888 = vunpack.c.h.b16 %v51
  %v889 = vunpack.c.l.b16 %v52
  %v890 = vunpack.c.h.b16 %v52
  %v891 = vunpack.c.l.b16 %v53
  %v892 = vunpack.c.l.b16 %v54
  %v893 = vunpack.c.h.b16 %v54
  %v894 = vunpack.c.l.b16 %v55
  %v895 = vunpack.c.h.b16 %v55
  %v896 = vunpack.c.l.b16 %v56
  %v897 = vunpack.c.h.b16 %v56
  %v898 = vunpack.c.l.b16 %v57
  %v899 = vunpack.c.h.b16 %v57
  %v900 = vunpack.c.l.b16 %v58
  %v901 = vunpack.c.h.b16 %v58
  %v902 = vunpack.c.l.b16 %v59
  %v903 = vunpack.c.h.b16 %v59
  %v904 = vunpack.c.l.b16 %v60
  %v905 = vunpack.c.h.b16 %v60
  %v906 = vunpack.c.l.b16 %v61
  %v907 = vunpack.c.h.b16 %v61
  %v908 = vunpack.c.l.b16 %v62
  %v909 = vunpack.c.h.b16 %v62
  %v910 = vunpack.c.l.b16 %v63
  %v911 = vunpack.c.h.b16 %v63
  %v912 = vunpack.c.l.b16 %v64
  %v913 = vunpack.c.h.b16 %v64
  %v914 = vunpack.c.l.b16 %v65
  %v915 = vunpack.c.l.b16 %v66
  %v916 = vunpack.c.h.b16 %v66
  %v917 = vunpack.c.l.b16 %v67
  %v918 = vunpack.c.h.b16 %v67
  %v919 = vunpack.c.l.b16 %v68
  %v920 = vunpack.c.h.b16 %v68
  %v921 = vunpack.c.l.b16 %v69
  %v922 = vunpack.c.h.b16 %v69
  %v923 = vunpack.c.l.b16 %v70
  %v924 = vunpack.c.h.b16 %v70
  %v925 = vunpack.c.l.b16 %v71
  %v926 = vunpack.c.h.b16 %v71
  %v927 = vunpack.c.l.b16 %v72
  %v928 = vunpack.c.h.b16 %v72
  %v929 = vunpack.c.l.b16 %v73
  %v930 = vunpack.c.h.b16 %v73
  %v931 = vunpack.c.l.b16 %v74
  %v932 = vunpack.c.h.b16 %v74
  %v933 = vunpack.c.l.b16 %v75
  %v934 = vunpack.c.h.b16 %v75
  %v935 = vunpack.c.l.b16 %v76
  %v936 = vunpack.c.h.b16 %v76
  %v937 = vunpack.c.l.b16 %v77
  %v938 = vpack.c.b16 %v869, %v846
  %v939 = vpack.c.b16 %v870, %v847
  %v940 = vpack.c.b16 %v871, %v848
  %v941 = vpack.c.b16 %v872, %v849
  %v942 = vpack.c.b16 %v873, %v850
  %v943 = vpack.c.b16 %v874, %v851
  %v944 = vpack.c.b16 %v875, %v852
  %v945 = vpack.c.b16 %v876, %v853
  %v946 = vpack.c.b16 %v877, %v854
  %v947 = vpack.c.b16 %v878, %v855
  %v948 = vpack.c.b16 %v879, %v856
  %v949 = vpack.c.b16 %v880, %v857
  %v950 = vpack.c.b16 %v881, %v858
  %v951 = vpack.c.b16 %v882, %v859
  %v952 = vpack.c.b16 %v883, %v860
  %v953 = vpack.c.b16 %v884, %v861
  %v954 = vpack.c.b16 %v885, %v862
  %v955 = vpack.c.b16 %v886, %v863
  %v956 = vpack.c.b16 %v887, %v864
  %v957 = vpack.c.b16 %v888, %v865
  %v958 = vpack.c.b16 %v889, %v866
  %v959 = vpack.c.b16 %v890, %v867
  %v960 = vpack.c.b16 %v891, %v868
  %v961 = vpack.c.b16 %v915, %v892
  %v962 = vpack.c.b16 %v916, %v893
  %v963 = vpack.c.b16 %v917, %v894
  %v964 = vpack.c.b16 %v918, %v895
  %v965 = vpack.c.b16 %v919, %v896
  %v966 = vpack.c.b16 %v920, %v897
  %v967 = vpack.c.b16 %v921, %v898
  %v968 = vpack.c.b16 %v922, %v899
  %v969 = vpack.c.b16 %v923, %v900
  %v970 = vpack.c.b16 %v924, %v901
  %v971 = vpack.c.b16 %v925, %v902
  %v972 = vpack.c.b16 %v926, %v903
  %v973 = vpack.c.b16 %v927, %v904
  %v974 = vpack.c.b16 %v928, %v905
  %v975 = vpack.c.b16 %v929, %v906
  %v976 = vpack.c.b16 %v930, %v907
  %v977 = vpack.c.b16 %v931, %v908
  %v978 = vpack.c.b16 %v932, %v909
  %v979 = vpack.c.b16 %v933, %v910
  %v980 = vpack.c.b16 %v934, %v911
  %v981 = vpack.c.b16 %v935, %v912
  %v982 = vpack.c.b16 %v936, %v913
  %v983 = vpack.c.b16 %v937, %v914
  %v1748 = vunpack.c.l.b16 %v78
  %v1749 = vunpack.c.h.b16 %v78
  %v1750 = vunpack.c.l.b16 %v79
  %v1751 = vunpack.c.l.b16 %v80
  %v1752 = vunpack.c.h.b16 %v80
  %v1753 = vunpack.c.l.b16 %v81
  %v1754 = vunpack.c.l.b16 %v82
  %v1755 = vunpack.c.h.b16 %v82
  %v1756 = vunpack.c.l.b16 %v83
  %v1757 = vunpack.c.l.b16 %v84
  %v1758 = vunpack.c.h.b16 %v84
  %v1759 = vunpack.c.l.b16 %v85
  %v1760 = vunpack.c.l.b16 %v86
  %v1761 = vunpack.c.h.b16 %v86
  %v1762 = vunpack.c.l.b16 %v87
  %v1763 = vunpack.c.l.b16 %v88
  %v1764 = vunpack.c.h.b16 %v88
  %v1765 = vunpack.c.l.b16 %v89
  %v1766 = vunpack.c.l.b16 %v90
  %v1767 = vunpack.c.h.b16 %v90
  %v1768 = vunpack.c.l.b16 %v91
  %v1769 = vunpack.c.l.b16 %v92
  %v1770 = vunpack.c.h.b16 %v92
  %v1771 = vunpack.c.l.b16 %v93
  %v1772 = vunpack.c.l.b16 %v94
  %v1773 = vunpack.c.h.b16 %v94
  %v1774 = vunpack.c.l.b16 %v95
  %v1775 = vunpack.c.l.b16 %v96
  %v1776 = vunpack.c.h.b16 %v96
  %v1777 = vunpack.c.l.b16 %v97
  %v1778 = vunpack.c.l.b16 %v98
  %v1779 = vunpack.c.h.b16 %v98
  %v1780 = vunpack.c.l.b16 %v99
  %v1781 = vunpack.c.l.b16 %v100
  %v1782 = vunpack.c.h.b16 %v100
  %v1783 = vunpack.c.l.b16 %v101
  %v1784 = vunpack.c.l.b16 %v102
  %v1785 = vunpack.c.h.b16 %v102
  %v1786 = vunpack.c.l.b16 %v103
  %v1787 = vunpack.c.l.b16 %v104
  %v1788 = vunpack.c.h.b16 %v104
  %v1789 = vunpack.c.l.b16 %v105
  %v1790 = vunpack.c.l.b16 %v106
  %v1791 = vunpack.c.h.b16 %v106
  %v1792 = vunpack.c.l.b16 %v107
  %v1793 = vunpack.c.l.b16 %v108
  %v1794 = vunpack.c.h.b16 %v108
  %v1795 = vunpack.c.l.b16 %v109
  %v1796 = vunpack.c.l.b16 %v110
  %v1797 = vunpack.c.h.b16 %v110
  %v1798 = vunpack.c.l.b16 %v111
  %v1799 = vunpack.c.l.b16 %v112
  %v1800 = vunpack.c.h.b16 %v112
  %v1801 = vunpack.c.l.b16 %v113
  %v1802 = vunpack.c.l.b16 %v114
  %v1803 = vunpack.c.h.b16 %v114
  %v1804 = vunpack.c.l.b16 %v115
  %v1805 = vunpack.c.l.b16 %v116
  %v1806 = vunpack.c.h.b16 %v116
  %v1807 = vunpack.c.l.b16 %v117
  %v1808 = vunpack.c.l.b16 %v118
  %v1809 = vunpack.c.h.b16 %v118
  %v1810 = vunpack.c.l.b16 %v119
  %v1811 = vunpack.c.l.b16 %v120
  %v1812 = vunpack.c.h.b16 %v120
  %v1813 = vunpack.c.l.b16 %v121
  %v1814 = vunpack.c.l.b16 %v122
  %v1815 = vunpack.c.h.b16 %v122
  %v1816 = vunpack.c.l.b16 %v123
  %v1817 = vunpack.c.l.b16 %v124
  %v1818 = vunpack.c.h.b16 %v124
  %v1819 = vunpack.c.l.b16 %v125
  %v1820 = vunpack.c.l.b16 %v126
  %v1821 = vunpack.c.h.b16 %v126
  %v1822 = vunpack.c.l.b16 %v127
  %v1823 = vunpack.c.l.b16 %v128
  %v1824 = vunpack.c.h.b16 %v128
  %v1825 = vunpack.c.l.b16 %v129
  %v1826 = vunpack.c.l.b16 %v130
  %v1827 = vunpack.c.h.b16 %v130
  %v1828 = vunpack.c.l.b16 %v131
  %v1829 = vunpack.c.l.b16 %v132
  %v1830 = vunpack.c.h.b16 %v132
  %v1831 = vunpack.c.l.b16 %v133
  %v1832 = vunpack.c.l.b16 %v134
  %v1833 = vunpack.c.h.b16 %v134
  %v1834 = vunpack.c.l.b16 %v135
  %v1835 = vunpack.c.l.b16 %v136
  %v1836 = vunpack.c.h.b16 %v136
  %v1837 = vunpack.c.l.b16 %v137
  %v1838 = vunpack.c.l.b16 %v138
  %v1839 = vunpack.c.h.b16 %v138
  %v1840 = vunpack.c.l.b16 %v139
  %v1841 = vunpack.c.l.b16 %v140
  %v1842 = vunpack.c.h.b16 %v140
  %v1843 = vunpack.c.l.b16 %v141
  %v1844 = vunpack.c.l.b16 %v142
  %v1845 = vunpack.c.h.b16 %v142
  %v1846 = vunpack.c.l.b16 %v143
  %v1847 = vunpack.c.l.b16 %v144
  %v1848 = vunpack.c.h.b16 %v144
  %v1849 = vunpack.c.l.b16 %v145
  %v1850 = vunpack.c.l.b16 %v146
  %v1851 = vunpack.c.h.b16 %v146
  %v1852 = vunpack.c.l.b16 %v147
  %v1853 = vunpack.c.l.b16 %v148
  %v1854 = vunpack.c.h.b16 %v148
  %v1855 = vunpack.c.l.b16 %v149
  %v1856 = vunpack.c.l.b16 %v150
  %v1857 = vunpack.c.h.b16 %v150
  %v1858 = vunpack.c.l.b16 %v151
  %v1859 = vunpack.c.l.b16 %v152
  %v1860 = vunpack.c.h.b16 %v152
  %v1861 = vunpack.c.l.b16 %v153
  %v1862 = vunpack.c.l.b16 %v154
  %v1863 = vunpack.c.h.b16 %v154
  %v1864 = vunpack.c.l.b16 %v155
  %v1865 = vunpack.c.l.b16 %v156
  %v1866 = vunpack.c.h.b16 %v156
  %v1867 = vunpack.c.l.b16 %v157
  %v1868 = vunpack.c.l.b16 %v158
  %v1869 = vunpack.c.h.b16 %v158
  %v1870 = vunpack.c.l.b16 %v159
  %v1871 = vunpack.c.l.b16 %v160
  %v1872 = vunpack.c.h.b16 %v160
  %v1873 = vunpack.c.l.b16 %v161
  %v1874 = vunpack.c.l.b16 %v162
  %v1875 = vunpack.c.h.b16 %v162
  %v1876 = vunpack.c.l.b16 %v163
  %v1877 = vunpack.c.l.b16 %v164
  %v1878 = vunpack.c.h.b16 %v164
  %v1879 = vunpack.c.l.b16 %v165
  %v1880 = vunpack.c.l.b16 %v166
  %v1881 = vunpack.c.h.b16 %v166
  %v1882 = vunpack.c.l.b16 %v167
  %v1883 = vunpack.c.l.b16 %v168
  %v1884 = vunpack.c.h.b16 %v168
  %v1885 = vunpack.c.l.b16 %v169
  %v1886 = vunpack.c.l.b16 %v170
  %v1887 = vunpack.c.h.b16 %v170
  %v1888 = vunpack.c.l.b16 %v171
  %v1889 = vunpack.c.l.b16 %v172
  %v1890 = vunpack.c.h.b16 %v172
  %v1891 = vunpack.c.l.b16 %v173
  %v1892 = vunpack.c.l.b16 %v174
  %v1893 = vunpack.c.h.b16 %v174
  %v1894 = vunpack.c.l.b16 %v175
  %v1895 = vunpack.c.l.b16 %v176
  %v1896 = vunpack.c.h.b16 %v176
  %v1897 = vunpack.c.l.b16 %v177
  %v1898 = vunpack.c.l.b16 %v178
  %v1899 = vunpack.c.h.b16 %v178
  %v1900 = vunpack.c.l.b16 %v179
  %v1901 = vunpack.c.l.b16 %v180
  %v1902 = vunpack.c.h.b16 %v180
  %v1903 = vunpack.c.l.b16 %v181
  %v1904 = vunpack.c.l.b16 %v182
  %v1905 = vunpack.c.h.b16 %v182
  %v1906 = vunpack.c.l.b16 %v183
  %v1907 = vunpack.c.l.b16 %v184
  %v1908 = vunpack.c.h.b16 %v184
  %v1909 = vunpack.c.l.b16 %v185
  %v1910 = vunpack.c.l.b16 %v186
  %v1911 = vunpack.c.h.b16 %v186
  %v1912 = vunpack.c.l.b16 %v187
  %v1913 = vunpack.c.l.b16 %v188
  %v1914 = vunpack.c.h.b16 %v188
  %v1915 = vunpack.c.l.b16 %v189
  %v1916 = vunpack.c.l.b16 %v190
  %v1917 = vunpack.c.h.b16 %v190
  %v1918 = vunpack.c.l.b16 %v191
  %v1919 = vunpack.c.l.b16 %v192
  %v1920 = vunpack.c.h.b16 %v192
  %v1921 = vunpack.c.l.b16 %v193
  %v1922 = vunpack.c.l.b16 %v194
  %v1923 = vunpack.c.h.b16 %v194
  %v1924 = vunpack.c.l.b16 %v195
  %v1925 = vunpack.c.l.b16 %v196
  %v1926 = vunpack.c.h.b16 %v196
  %v1927 = vunpack.c.l.b16 %v197
  %v1928 = vunpack.c.l.b16 %v198
  %v1929 = vunpack.c.h.b16 %v198
  %v1930 = vunpack.c.l.b16 %v199
  %v1931 = vunpack.c.l.b16 %v200
  %v1932 = vunpack.c.h.b16 %v200
  %v1933 = vunpack.c.l.b16 %v201
  %v1934 = vunpack.c.l.b16 %v202
  %v1935 = vunpack.c.h.b16 %v202
  %v1936 = vunpack.c.l.b16 %v203
  %v1937 = vunpack.c.l.b16 %v204
  %v1938 = vunpack.c.h.b16 %v204
  %v1939 = vunpack.c.l.b16 %v205
  %v1940 = vunpack.c.l.b16 %v206
  %v1941 = vunpack.c.h.b16 %v206
  %v1942 = vunpack.c.l.b16 %v207
  %v1943 = vunpack.c.l.b16 %v208
  %v1944 = vunpack.c.h.b16 %v208
  %v1945 = vunpack.c.l.b16 %v209
  %v1946 = vunpack.c.l.b16 %v210
  %v1947 = vunpack.c.h.b16 %v210
  %v1948 = vunpack.c.l.b16 %v211
  %v1949 = vunpack.c.l.b16 %v212
  %v1950 = vunpack.c.h.b16 %v212
  %v1951 = vunpack.c.l.b16 %v213
  %v1952 = vunpack.c.l.b16 %v214
  %v1953 = vunpack.c.h.b16 %v214
  %v1954 = vunpack.c.l.b16 %v215
  %v1955 = vunpack.c.l.b16 %v216
  %v1956 = vunpack.c.h.b16 %v216
  %v1957 = vunpack.c.l.b16 %v217
  %v1958 = vunpack.c.l.b16 %v218
  %v1959 = vunpack.c.h.b16 %v218
  %v1960 = vunpack.c.l.b16 %v219
  %v1961 = vunpack.c.l.b16 %v220
  %v1962 = vunpack.c.h.b16 %v220
  %v1963 = vunpack.c.l.b16 %v221
  %v1964 = vunpack.c.l.b16 %v222
  %v1965 = vunpack.c.h.b16 %v222
  %v1966 = vunpack.c.l.b16 %v223
  %v1967 = vunpack.c.l.b16 %v224
  %v1968 = vunpack.c.h.b16 %v224
  %v1969 = vunpack.c.l.b16 %v225
  %v1970 = vunpack.c.l.b16 %v226
  %v1971 = vunpack.c.h.b16 %v226
  %v1972 = vunpack.c.l.b16 %v227
  %v1973 = vunpack.c.l.b16 %v228
  %v1974 = vunpack.c.h.b16 %v228
  %v1975 = vunpack.c.l.b16 %v229
  %v1976 = vunpack.c.l.b16 %v230
  %v1977 = vunpack.c.h.b16 %v230
  %v1978 = vunpack.c.l.b16 %v231
  %v1979 = vunpack.c.l.b16 %v232
  %v1980 = vunpack.c.h.b16 %v232
  %v1981 = vunpack.c.l.b16 %v233
  %v1982 = vunpack.c.l.b16 %v234
  %v1983 = vunpack.c.h.b16 %v234
  %v1984 = vunpack.c.l.b16 %v235
  %v1985 = vunpack.c.l.b16 %v236
  %v1986 = vunpack.c.h.b16 %v236
  %v1987 = vunpack.c.l.b16 %v237
  %v1988 = vunpack.c.l.b16 %v238
  %v1989 = vunpack.c.h.b16 %v238
  %v1990 = vunpack.c.l.b16 %v239
  %v1991 = vunpack.c.l.b16 %v240
  %v1992 = vunpack.c.h.b16 %v240
  %v1993 = vunpack.c.l.b16 %v241
  %v1994 = vunpack.c.l.b16 %v242
  %v1995 = vunpack.c.h.b16 %v242
  %v1996 = vunpack.c.l.b16 %v243
  %v1997 = vunpack.c.l.b16 %v244
  %v1998 = vunpack.c.h.b16 %v244
  %v1999 = vunpack.c.l.b16 %v245
  %v2000 = vunpack.c.l.b16 %v246
  %v2001 = vunpack.c.h.b16 %v246
  %v2002 = vunpack.c.l.b16 %v247
  %v2003 = vunpack.c.l.b16 %v248
  %v2004 = vunpack.c.h.b16 %v248
  %v2005 = vunpack.c.l.b16 %v249
  %v2006 = vunpack.c.l.b16 %v250
  %v2007 = vunpack.c.h.b16 %v250
  %v2008 = vunpack.c.l.b16 %v251
  %v2009 = vunpack.c.l.b16 %v252
  %v2010 = vunpack.c.h.b16 %v252
  %v2011 = vunpack.c.l.b16 %v253
  %v2012 = vunpack.c.l.b16 %v254
  %v2013 = vunpack.c.h.b16 %v254
  %v2014 = vunpack.c.l.b16 %v255
  %v2015 = vunpack.c.l.b16 %v256
  %v2016 = vunpack.c.h.b16 %v256
  %v2017 = vunpack.c.l.b16 %v257
  %v2018 = vunpack.c.l.b16 %v258
  %v2019 = vunpack.c.h.b16 %v258
  %v2020 = vunpack.c.l.b16 %v259
  %v2021 = vunpack.c.l.b16 %v260
  %v2022 = vunpack.c.h.b16 %v260
  %v2023 = vunpack.c.l.b16 %v261
  %v2024 = vunpack.c.l.b16 %v262
  %v2025 = vunpack.c.h.b16 %v262
  %v2026 = vunpack.c.l.b16 %v263
  %v2027 = vunpack.c.l.b16 %v264
  %v2028 = vunpack.c.h.b16 %v264
  %v2029 = vunpack.c.l.b16 %v265
  %v2030 = vunpack.c.l.b16 %v266
  %v2031 = vunpack.c.h.b16 %v266
  %v2032 = vunpack.c.l.b16 %v267
  %v2033 = vunpack.c.l.b16 %v268
  %v2034 = vunpack.c.h.b16 %v268
  %v2035 = vunpack.c.l.b16 %v269
  %v2036 = vunpack.c.l.b16 %v270
  %v2037 = vunpack.c.h.b16 %v270
  %v2038 = vunpack.c.l.b16 %v271
  %v2039 = vunpack.c.l.b16 %v272
  %v2040 = vunpack.c.h.b16 %v272
  %v2041 = vunpack.c.l.b16 %v273
  %v2042 = vunpack.c.l.b16 %v274
  %v2043 = vunpack.c.h.b16 %v274
  %v2044 = vunpack.c.l.b16 %v275
  %v2045 = vunpack.c.l.b16 %v276
  %v2046 = vunpack.c.h.b16 %v276
  %v2047 = vunpack.c.l.b16 %v277
  %v2048 = vunpack.c.l.b16 %v278
  %v2049 = vunpack.c.h.b16 %v278
  %v2050 = vunpack.c.l.b16 %v279
  %v2051 = vunpack.c.l.b16 %v280
  %v2052 = vunpack.c.h.b16 %v280
  %v2053 = vunpack.c.l.b16 %v281
  %v2054 = vunpack.c.l.b16 %v282
  %v2055 = vunpack.c.h.b16 %v282
  %v2056 = vunpack.c.l.b16 %v283
  %v2057 = vunpack.c.l.b16 %v284
  %v2058 = vunpack.c.h.b16 %v284
  %v2059 = vunpack.c.l.b16 %v285
  %v2060 = vunpack.c.l.b16 %v286
  %v2061 = vunpack.c.h.b16 %v286
  %v2062 = vunpack.c.l.b16 %v287
  %v2063 = vunpack.c.l.b16 %v288
  %v2064 = vunpack.c.h.b16 %v288
  %v2065 = vunpack.c.l.b16 %v289
  %v2066 = vunpack.c.l.b16 %v290
  %v2067 = vunpack.c.h.b16 %v290
  %v2068 = vunpack.c.l.b16 %v291
  %v2069 = vunpack.c.l.b16 %v292
  %v2070 = vunpack.c.h.b16 %v292
  %v2071 = vunpack.c.l.b16 %v293
  %v2072 = vunpack.c.l.b16 %v294
  %v2073 = vunpack.c.h.b16 %v294
  %v2074 = vunpack.c.l.b16 %v295
  %v2075 = vunpack.c.l.b16 %v296
  %v2076 = vunpack.c.h.b16 %v296
  %v2077 = vunpack.c.l.b16 %v297
  %v2078 = vunpack.c.l.b16 %v298
  %v2079 = vunpack.c.h.b16 %v298
  %v2080 = vunpack.c.l.b16 %v299
  %v2081 = vunpack.c.l.b16 %v300
  %v2082 = vunpack.c.h.b16 %v300
  %v2083 = vunpack.c.l.b16 %v301
  %v2084 = vunpack.c.l.b16 %v302
  %v2085 = vunpack.c.h.b16 %v302
  %v2086 = vunpack.c.l.b16 %v303
  %v2087 = vunpack.c.l.b16 %v304
  %v2088 = vunpack.c.h.b16 %v304
  %v2089 = vunpack.c.l.b16 %v305
  %v2090 = vunpack.c.l.b16 %v306
  %v2091 = vunpack.c.h.b16 %v306
  %v2092 = vunpack.c.l.b16 %v307
  %v2093 = vunpack.c.l.b16 %v308
  %v2094 = vunpack.c.h.b16 %v308
  %v2095 = vunpack.c.l.b16 %v309
  %v2096 = vunpack.c.l.b16 %v310
  %v2097 = vunpack.c.h.b16 %v310
  %v2098 = vunpack.c.l.b16 %v311
  %v2099 = vunpack.c.l.b16 %v312
  %v2100 = vunpack.c.h.b16 %v312
  %v2101 = vunpack.c.l.b16 %v313
  %v2102 = vunpack.c.l.b16 %v314
  %v2103 = vunpack.c.h.b16 %v314
  %v2104 = vunpack.c.l.b16 %v315
  %v2105 = vunpack.c.l.b16 %v316
  %v2106 = vunpack.c.h.b16 %v316
  %v2107 = vunpack.c.l.b16 %v317
  %v2108 = vunpack.c.l.b16 %v318
  %v2109 = vunpack.c.h.b16 %v318
  %v2110 = vunpack.c.l.b16 %v319
  %v2111 = vunpack.c.l.b16 %v320
  %v2112 = vunpack.c.h.b16 %v320
  %v2113 = vunpack.c.l.b16 %v321
  %v2114 = vunpack.c.l.b16 %v322
  %v2115 = vunpack.c.h.b16 %v322
  %v2116 = vunpack.c.l.b16 %v323
  %v2117 = vunpack.c.l.b16 %v324
  %v2118 = vunpack.c.h.b16 %v324
  %v2119 = vunpack.c.l.b16 %v325
  %v2120 = vunpack.c.l.b16 %v326
  %v2121 = vunpack.c.h.b16 %v326
  %v2122 = vunpack.c.l.b16 %v327
  %v2123 = vunpack.c.l.b16 %v328
  %v2124 = vunpack.c.h.b16 %v328
  %v2125 = vunpack.c.l.b16 %v329
  %v2126 = vunpack.c.l.b16 %v330
  %v2127 = vunpack.c.h.b16 %v330
  %v2128 = vunpack.c.l.b16 %v331
  %v2129 = vunpack.c.l.b16 %v332
  %v2130 = vunpack.c.h.b16 %v332
  %v2131 = vunpack.c.l.b16 %v333
  %v2132 = vunpack.c.l.b16 %v334
  %v2133 = vunpack.c.h.b16 %v334
  %v2134 = vunpack.c.l.b16 %v335
  %v2135 = vunpack.c.l.b16 %v336
  %v2136 = vunpack.c.h.b16 %v336
  %v2137 = vunpack.c.l.b16 %v337
  %v2138 = vunpack.c.l.b16 %v338
  %v2139 = vunpack.c.h.b16 %v338
  %v2140 = vunpack.c.l.b16 %v339
  %v2141 = vunpack.c.l.b16 %v340
  %v2142 = vunpack.c.h.b16 %v340
  %v2143 = vunpack.c.l.b16 %v341
  %v2144 = vunpack.c.l.b16 %v342
  %v2145 = vunpack.c.h.b16 %v342
  %v2146 = vunpack.c.l.b16 %v343
  %v2147 = vunpack.c.l.b16 %v344
  %v2148 = vunpack.c.h.b16 %v344
  %v2149 = vunpack.c.l.b16 %v345
  %v2150 = vunpack.c.l.b16 %v346
  %v2151 = vunpack.c.h.b16 %v346
  %v2152 = vunpack.c.l.b16 %v347
  %v2153 = vunpack.c.l.b16 %v348
  %v2154 = vunpack.c.h.b16 %v348
  %v2155 = vunpack.c.l.b16 %v349
  %v2156 = vunpack.c.l.b16 %v350
  %v2157 = vunpack.c.h.b16 %v350
  %v2158 = vunpack.c.l.b16 %v351
  %v2159 = vunpack.c.l.b16 %v352
  %v2160 = vunpack.c.h.b16 %v352
  %v2161 = vunpack.c.l.b16 %v353
  %v2162 = vunpack.c.l.b16 %v354
  %v2163 = vunpack.c.h.b16 %v354
  %v2164 = vunpack.c.l.b16 %v355
  %v2165 = vunpack.c.l.b16 %v356
  %v2166 = vunpack.c.h.b16 %v356
  %v2167 = vunpack.c.l.b16 %v357
  %v2168 = vunpack.c.l.b16 %v358
  %v2169 = vunpack.c.h.b16 %v358
  %v2170 = vunpack.c.l.b16 %v359
  %v2171 = vunpack.c.l.b16 %v360
  %v2172 = vunpack.c.h.b16 %v360
  %v2173 = vunpack.c.l.b16 %v361
  %v2174 = vunpack.c.l.b16 %v362
  %v2175 = vunpack.c.h.b16 %v362
  %v2176 = vunpack.c.l.b16 %v363
  %v2177 = vunpack.c.l.b16 %v364
  %v2178 = vunpack.c.h.b16 %v364
  %v2179 = vunpack.c.l.b16 %v365
  %v2180 = vunpack.c.l.b16 %v366
  %v2181 = vunpack.c.h.b16 %v366
  %v2182 = vunpack.c.l.b16 %v367
  %v2183 = vunpack.c.l.b16 %v368
  %v2184 = vunpack.c.h.b16 %v368
  %v2185 = vunpack.c.l.b16 %v369
  %v2186 = vunpack.c.l.b16 %v370
  %v2187 = vunpack.c.h.b16 %v370
  %v2188 = vunpack.c.l.b16 %v371
  %v2189 = vunpack.c.l.b16 %v372
  %v2190 = vunpack.c.h.b16 %v372
  %v2191 = vunpack.c.l.b16 %v373
  %v2192 = vunpack.c.l.b16 %v374
  %v2193 = vunpack.c.h.b16 %v374
  %v2194 = vunpack.c.l.b16 %v375
  %v2195 = vunpack.c.l.b16 %v376
  %v2196 = vunpack.c.h.b16 %v376
  %v2197 = vunpack.c.l.b16 %v377
  %v2198 = vunpack.c.l.b16 %v378
  %v2199 = vunpack.c.h.b16 %v378
  %v2200 = vunpack.c.l.b16 %v379
  %v2201 = vunpack.c.l.b16 %v380
  %v2202 = vunpack.c.h.b16 %v380
  %v2203 = vunpack.c.l.b16 %v381
  %v2204 = vunpack.c.l.b16 %v382
  %v2205 = vunpack.c.h.b16 %v382
  %v2206 = vunpack.c.l.b16 %v383
  %v2207 = vunpack.c.l.b16 %v384
  %v2208 = vunpack.c.h.b16 %v384
  %v2209 = vunpack.c.l.b16 %v385
  %v2210 = vunpack.c.l.b16 %v386
  %v2211 = vunpack.c.h.b16 %v386
  %v2212 = vunpack.c.l.b16 %v387
  %v2213 = vunpack.c.l.b16 %v388
  %v2214 = vunpack.c.h.b16 %v388
  %v2215 = vunpack.c.l.b16 %v389
  %v2216 = vunpack.c.l.b16 %v390
  %v2217 = vunpack.c.h.b16 %v390
  %v2218 = vunpack.c.l.b16 %v391
  %v2219 = vunpack.c.l.b16 %v392
  %v2220 = vunpack.c.h.b16 %v392
  %v2221 = vunpack.c.l.b16 %v393
  %v2222 = vunpack.c.l.b16 %v394
  %v2223 = vunpack.c.h.b16 %v394
  %v2224 = vunpack.c.l.b16 %v395
  %v2225 = vunpack.c.l.b16 %v396
  %v2226 = vunpack.c.h.b16 %v396
  %v2227 = vunpack.c.l.b16 %v397
  %v2228 = vunpack.c.l.b16 %v398
  %v2229 = vunpack.c.h.b16 %v398
  %v2230 = vunpack.c.l.b16 %v399
  %v2231 = vunpack.c.l.b16 %v400
  %v2232 = vunpack.c.h.b16 %v400
  %v2233 = vunpack.c.l.b16 %v401
  %v2234 = vunpack.c.l.b16 %v402
  %v2235 = vunpack.c.h.b16 %v402
  %v2236 = vunpack.c.l.b16 %v403
  %v2237 = vunpack.c.l.b16 %v404
  %v2238 = vunpack.c.h.b16 %v404
  %v2239 = vunpack.c.l.b16 %v405
  %v2240 = vunpack.c.l.b16 %v406
  %v2241 = vunpack.c.h.b16 %v406
  %v2242 = vunpack.c.l.b16 %v407
  %v2243 = vunpack.c.l.b16 %v408
  %v2244 = vunpack.c.h.b16 %v408
  %v2245 = vunpack.c.l.b16 %v409
  %v2246 = vunpack.c.l.b16 %v410
  %v2247 = vunpack.c.h.b16 %v410
  %v2248 = vunpack.c.l.b16 %v411
  %v2249 = vunpack.c.l.b16 %v412
  %v2250 = vunpack.c.h.b16 %v412
  %v2251 = vunpack.c.l.b16 %v413
  %v2252 = vunpack.c.l.b16 %v414
  %v2253 = vunpack.c.h.b16 %v414
  %v2254 = vunpack.c.l.b16 %v415
  %v2255 = vunpack.c.l.b16 %v416
  %v2256 = vunpack.c.h.b16 %v416
  %v2257 = vunpack.c.l.b16 %v417
  %v2258 = vunpack.c.l.b16 %v418
  %v2259 = vunpack.c.h.b16 %v418
  %v2260 = vunpack.c.l.b16 %v419
  %v2261 = vunpack.c.l.b16 %v420
  %v2262 = vunpack.c.h.b16 %v420
  %v2263 = vunpack.c.l.b16 %v421
  %v2264 = vunpack.c.l.b16 %v422
  %v2265 = vunpack.c.h.b16 %v422
  %v2266 = vunpack.c.l.b16 %v423
  %v2267 = vunpack.c.l.b16 %v424
  %v2268 = vunpack.c.h.b16 %v424
  %v2269 = vunpack.c.l.b16 %v425
  %v2270 = vunpack.c.l.b16 %v426
  %v2271 = vunpack.c.h.b16 %v426
  %v2272 = vunpack.c.l.b16 %v427
  %v2273 = vunpack.c.l.b16 %v428
  %v2274 = vunpack.c.h.b16 %v428
  %v2275 = vunpack.c.l.b16 %v429
  %v2276 = vunpack.c.l.b16 %v430
  %v2277 = vunpack.c.h.b16 %v430
  %v2278 = vunpack.c.l.b16 %v431
  %v2279 = vunpack.c.l.b16 %v432
  %v2280 = vunpack.c.h.b16 %v432
  %v2281 = vunpack.c.l.b16 %v433
  %v2282 = vunpack.c.l.b16 %v434
  %v2283 = vunpack.c.h.b16 %v434
  %v2284 = vunpack.c.l.b16 %v435
  %v2285 = vunpack.c.l.b16 %v436
  %v2286 = vunpack.c.h.b16 %v436
  %v2287 = vunpack.c.l.b16 %v437
  %v2288 = vunpack.c.l.b16 %v438
  %v2289 = vunpack.c.h.b16 %v438
  %v2290 = vunpack.c.l.b16 %v439
  %v2291 = vunpack.c.l.b16 %v440
  %v2292 = vunpack.c.h.b16 %v440
  %v2293 = vunpack.c.l.b16 %v441
  %v2294 = vunpack.c.l.b16 %v442
  %v2295 = vunpack.c.h.b16 %v442
  %v2296 = vunpack.c.l.b16 %v443
  %v2297 = vunpack.c.l.b16 %v444
  %v2298 = vunpack.c.h.b16 %v444
  %v2299 = vunpack.c.l.b16 %v445
  %v2300 = vunpack.c.l.b16 %v446
  %v2301 = vunpack.c.h.b16 %v446
  %v2302 = vunpack.c.l.b16 %v447
  %v2303 = vunpack.c.l.b16 %v448
  %v2304 = vunpack.c.h.b16 %v448
  %v2305 = vunpack.c.l.b16 %v449
  %v2306 = vunpack.c.l.b16 %v450
  %v2307 = vunpack.c.h.b16 %v450
  %v2308 = vunpack.c.l.b16 %v451
  %v2309 = vunpack.c.l.b16 %v452
  %v2310 = vunpack.c.h.b16 %v452
  %v2311 = vunpack.c.l.b16 %v453
  %v2312 = vunpack.c.l.b16 %v454
  %v2313 = vunpack.c.h.b16 %v454
  %v2314 = vunpack.c.l.b16 %v455
  %v2315 = vunpack.c.l.b16 %v456
  %v2316 = vunpack.c.h.b16 %v456
  %v2317 = vunpack.c.l.b16 %v457
  %v2318 = vunpack.c.l.b16 %v458
  %v2319 = vunpack.c.h.b16 %v458
  %v2320 = vunpack.c.l.b16 %v459
  %v2321 = vunpack.c.l.b16 %v460
  %v2322 = vunpack.c.h.b16 %v460
  %v2323 = vunpack.c.l.b16 %v461
  %v2324 = vunpack.c.l.b16 %v462
  %v2325 = vunpack.c.h.b16 %v462
  %v2326 = vunpack.c.l.b16 %v463
  %v2327 = vunpack.c.l.b16 %v464
  %v2328 = vunpack.c.h.b16 %v464
  %v2329 = vunpack.c.l.b16 %v465
  %v2330 = vunpack.c.l.b16 %v466
  %v2331 = vunpack.c.h.b16 %v466
  %v2332 = vunpack.c.l.b16 %v467
  %v2333 = vunpack.c.l.b16 %v468
  %v2334 = vunpack.c.h.b16 %v468
  %v2335 = vunpack.c.l.b16 %v469
  %v2336 = vunpack.c.l.b16 %v470
  %v2337 = vunpack.c.h.b16 %v470
  %v2338 = vunpack.c.l.b16 %v471
  %v2339 = vunpack.c.l.b16 %v472
  %v2340 = vunpack.c.h.b16 %v472
  %v2341 = vunpack.c.l.b16 %v473
  %v2342 = vunpack.c.l.b16 %v474
  %v2343 = vunpack.c.h.b16 %v474
  %v2344 = vunpack.c.l.b16 %v475
  %v2345 = vunpack.c.l.b16 %v476
  %v2346 = vunpack.c.h.b16 %v476
  %v2347 = vunpack.c.l.b16 %v477
  %v2348 = vunpack.c.l.b16 %v478
  %v2349 = vunpack.c.h.b16 %v478
  %v2350 = vunpack.c.l.b16 %v479
  %v2351 = vunpack.c.l.b16 %v480
  %v2352 = vunpack.c.h.b16 %v480
  %v2353 = vunpack.c.l.b16 %v481
  %v2354 = vunpack.c.l.b16 %v482
  %v2355 = vunpack.c.h.b16 %v482
  %v2356 = vunpack.c.l.b16 %v483
  %v2357 = vunpack.c.l.b16 %v484
  %v2358 = vunpack.c.h.b16 %v484
  %v2359 = vunpack.c.l.b16 %v485
  %v2360 = vunpack.c.l.b16 %v486
  %v2361 = vunpack.c.h.b16 %v486
  %v2362 = vunpack.c.l.b16 %v487
  %v2363 = vunpack.c.l.b16 %v488
  %v2364 = vunpack.c.h.b16 %v488
  %v2365 = vunpack.c.l.b16 %v489
  %v2366 = vunpack.c.l.b16 %v490
  %v2367 = vunpack.c.h.b16 %v490
  %v2368 = vunpack.c.l.b16 %v491
  %v2369 = vunpack.c.l.b16 %v492
  %v2370 = vunpack.c.h.b16 %v492
  %v2371 = vunpack.c.l.b16 %v493
  %v2372 = vunpack.c.l.b16 %v494
  %v2373 = vunpack.c.h.b16 %v494
  %v2374 = vunpack.c.l.b16 %v495
  %v2375 = vunpack.c.l.b16 %v496
  %v2376 = vunpack.c.h.b16 %v496
  %v2377 = vunpack.c.l.b16 %v497
  %v2378 = vunpack.c.l.b16 %v498
  %v2379 = vunpack.c.h.b16 %v498
  %v2380 = vunpack.c.l.b16 %v499
  %v2381 = vunpack.c.l.b16 %v500
  %v2382 = vunpack.c.h.b16 %v500
  %v2383 = vunpack.c.l.b16 %v501
  %v2384 = vunpack.c.l.b16 %v502
  %v2385 = vunpack.c.h.b16 %v502
  %v2386 = vunpack.c.l.b16 %v503
  %v2387 = vunpack.c.l.b16 %v504
  %v2388 = vunpack.c.h.b16 %v504
  %v2389 = vunpack.c.l.b16 %v505
  %v2390 = vunpack.c.l.b16 %v506
  %v2391 = vunpack.c.h.b16 %v506
  %v2392 = vunpack.c.l.b16 %v507
  %v2393 = vunpack.c.l.b16 %v508
  %v2394 = vunpack.c.h.b16 %v508
  %v2395 = vunpack.c.l.b16 %v509
  %v2396 = vunpack.c.l.b16 %v510
  %v2397 = vunpack.c.h.b16 %v510
  %v2398 = vunpack.c.l.b16 %v511
  %v2399 = vunpack.c.l.b16 %v512
  %v2400 = vunpack.c.h.b16 %v512
  %v2401 = vunpack.c.l.b16 %v513
  %v2402 = vunpack.c.l.b16 %v514
  %v2403 = vunpack.c.h.b16 %v514
  %v2404 = vunpack.c.l.b16 %v515
  %v2405 = vunpack.c.l.b16 %v516
  %v2406 = vunpack.c.h.b16 %v516
  %v2407 = vunpack.c.l.b16 %v517
  %v2408 = vunpack.c.l.b16 %v518
  %v2409 = vunpack.c.h.b16 %v518
  %v2410 = vunpack.c.l.b16 %v519
  %v2411 = vunpack.c.l.b16 %v520
  %v2412 = vunpack.c.h.b16 %v520
  %v2413 = vunpack.c.l.b16 %v521
  %v2414 = vunpack.c.l.b16 %v522
  %v2415 = vunpack.c.h.b16 %v522
  %v2416 = vunpack.c.l.b16 %v523
  %v2417 = vunpack.c.l.b16 %v524
  %v2418 = vunpack.c.h.b16 %v524
  %v2419 = vunpack.c.l.b16 %v525
  %v2420 = vunpack.c.l.b16 %v526
  %v2421 = vunpack.c.h.b16 %v526
  %v2422 = vunpack.c.l.b16 %v527
  %v2423 = vunpack.c.l.b16 %v528
  %v2424 = vunpack.c.h.b16 %v528
  %v2425 = vunpack.c.l.b16 %v529
  %v2426 = vunpack.c.l.b16 %v530
  %v2427 = vunpack.c.h.b16 %v530
  %v2428 = vunpack.c.l.b16 %v531
  %v2429 = vunpack.c.l.b16 %v532
  %v2430 = vunpack.c.h.b16 %v532
  %v2431 = vunpack.c.l.b16 %v533
  %v2432 = vunpack.c.l.b16 %v534
  %v2433 = vunpack.c.h.b16 %v534
  %v2434 = vunpack.c.l.b16 %v535
  %v2435 = vunpack.c.l.b16 %v536
  %v2436 = vunpack.c.h.b16 %v536
  %v2437 = vunpack.c.l.b16 %v537
  %v2438 = vunpack.c.l.b16 %v538
  %v2439 = vunpack.c.h.b16 %v538
  %v2440 = vunpack.c.l.b16 %v539
  %v2441 = vunpack.c.l.b16 %v540
  %v2442 = vunpack.c.h.b16 %v540
  %v2443 = vunpack.c.l.b16 %v541
  %v2444 = vunpack.c.l.b16 %v542
  %v2445 = vunpack.c.h.b16 %v542
  %v2446 = vunpack.c.l.b16 %v543
  %v2447 = vunpack.c.l.b16 %v544
  %v2448 = vunpack.c.h.b16 %v544
  %v2449 = vunpack.c.l.b16 %v545
  %v2450 = vunpack.c.l.b16 %v546
  %v2451 = vunpack.c.h.b16 %v546
  %v2452 = vunpack.c.l.b16 %v547
  %v2453 = vunpack.c.l.b16 %v548
  %v2454 = vunpack.c.h.b16 %v548
  %v2455 = vunpack.c.l.b16 %v549
  %v2456 = vunpack.c.l.b16 %v550
  %v2457 = vunpack.c.h.b16 %v550
  %v2458 = vunpack.c.l.b16 %v551
  %v2459 = vunpack.c.l.b16 %v552
  %v2460 = vunpack.c.h.b16 %v552
  %v2461 = vunpack.c.l.b16 %v553
  %v2462 = vunpack.c.l.b16 %v554
  %v2463 = vunpack.c.h.b16 %v554
  %v2464 = vunpack.c.l.b16 %v555
  %v2465 = vunpack.c.l.b16 %v556
  %v2466 = vunpack.c.h.b16 %v556
  %v2467 = vunpack.c.l.b16 %v557
  %v2468 = vunpack.c.l.b16 %v558
  %v2469 = vunpack.c.h.b16 %v558
  %v2470 = vunpack.c.l.b16 %v559
  %v2471 = vunpack.c.l.b16 %v560
  %v2472 = vunpack.c.h.b16 %v560
  %v2473 = vunpack.c.l.b16 %v561
  %v2474 = vunpack.c.l.b16 %v562
  %v2475 = vunpack.c.h.b16 %v562
  %v2476 = vunpack.c.l.b16 %v563
  %v2477 = vunpack.c.l.b16 %v564
  %v2478 = vunpack.c.h.b16 %v564
  %v2479 = vunpack.c.l.b16 %v565
  %v2480 = vunpack.c.l.b16 %v566
  %v2481 = vunpack.c.h.b16 %v566
  %v2482 = vunpack.c.l.b16 %v567
  %v2483 = vunpack.c.l.b16 %v568
  %v2484 = vunpack.c.h.b16 %v568
  %v2485 = vunpack.c.l.b16 %v569
  %v2486 = vunpack.c.l.b16 %v570
  %v2487 = vunpack.c.h.b16 %v570
  %v2488 = vunpack.c.l.b16 %v571
  %v2489 = vunpack.c.l.b16 %v572
  %v2490 = vunpack.c.h.b16 %v572
  %v2491 = vunpack.c.l.b16 %v573
  %v2492 = vunpack.c.l.b16 %v574
  %v2493 = vunpack.c.h.b16 %v574
  %v2494 = vunpack.c.l.b16 %v575
  %v2495 = vunpack.c.l.b16 %v576
  %v2496 = vunpack.c.h.b16 %v576
  %v2497 = vunpack.c.l.b16 %v577
  %v2498 = vunpack.c.l.b16 %v578
  %v2499 = vunpack.c.h.b16 %v578
  %v2500 = vunpack.c.l.b16 %v579
  %v2501 = vunpack.c.l.b16 %v580
  %v2502 = vunpack.c.h.b16 %v580
  %v2503 = vunpack.c.l.b16 %v581
  %v2504 = vunpack.c.l.b16 %v582
  %v2505 = vunpack.c.h.b16 %v582
  %v2506 = vunpack.c.l.b16 %v583
  %v2507 = vunpack.c.l.b16 %v584
  %v2508 = vunpack.c.h.b16 %v584
  %v2509 = vunpack.c.l.b16 %v585
  %v2510 = vunpack.c.l.b16 %v586
  %v2511 = vunpack.c.h.b16 %v586
  %v2512 = vunpack.c.l.b16 %v587
  %v2513 = vunpack.c.l.b16 %v588
  %v2514 = vunpack.c.h.b16 %v588
  %v2515 = vunpack.c.l.b16 %v589
  %v2516 = vunpack.c.l.b16 %v590
  %v2517 = vunpack.c.h.b16 %v590
  %v2518 = vunpack.c.l.b16 %v591
  %v2519 = vunpack.c.l.b16 %v592
  %v2520 = vunpack.c.h.b16 %v592
  %v2521 = vunpack.c.l.b16 %v593
  %v2522 = vunpack.c.l.b16 %v594
  %v2523 = vunpack.c.h.b16 %v594
  %v2524 = vunpack.c.l.b16 %v595
  %v2525 = vunpack.c.l.b16 %v596
  %v2526 = vunpack.c.h.b16 %v596
  %v2527 = vunpack.c.l.b16 %v597
  %v2528 = vunpack.c.l.b16 %v598
  %v2529 = vunpack.c.h.b16 %v598
  %v2530 = vunpack.c.l.b16 %v599
  %v2531 = vunpack.c.l.b16 %v600
  %v2532 = vunpack.c.h.b16 %v600
  %v2533 = vunpack.c.l.b16 %v601
  %v2534 = vunpack.c.l.b16 %v602
  %v2535 = vunpack.c.h.b16 %v602
  %v2536 = vunpack.c.l.b16 %v603
  %v2537 = vunpack.c.l.b16 %v604
  %v2538 = vunpack.c.h.b16 %v604
  %v2539 = vunpack.c.l.b16 %v605
  %v2540 = vunpack.c.l.b16 %v606
  %v2541 = vunpack.c.h.b16 %v606
  %v2542 = vunpack.c.l.b16 %v607
  %v2543 = vunpack.c.l.b16 %v608
  %v2544 = vunpack.c.h.b16 %v608
  %v2545 = vunpack.c.l.b16 %v609
  %v2546 = vunpack.c.l.b16 %v610
  %v2547 = vunpack.c.h.b16 %v610
  %v2548 = vunpack.c.l.b16 %v611
  %v2549 = vunpack.c.l.b16 %v612
  %v2550 = vunpack.c.h.b16 %v612
  %v2551 = vunpack.c.l.b16 %v613
  %v2552 = vunpack.c.l.b16 %v614
  %v2553 = vunpack.c.h.b16 %v614
  %v2554 = vunpack.c.l.b16 %v615
  %v2555 = vunpack.c.l.b16 %v616
  %v2556 = vunpack.c.h.b16 %v616
  %v2557 = vunpack.c.l.b16 %v617
  %v2558 = vunpack.c.l.b16 %v618
  %v2559 = vunpack.c.h.b16 %v618
  %v2560 = vunpack.c.l.b16 %v619
  %v2561 = vunpack.c.l.b16 %v620
  %v2562 = vunpack.c.h.b16 %v620
  %v2563 = vunpack.c.l.b16 %v621
  %v2564 = vunpack.c.l.b16 %v622
  %v2565 = vunpack.c.h.b16 %v622
  %v2566 = vunpack.c.l.b16 %v623
  %v2567 = vunpack.c.l.b16 %v624
  %v2568 = vunpack.c.h.b16 %v624
  %v2569 = vunpack.c.l.b16 %v625
  %v2570 = vunpack.c.l.b16 %v626
  %v2571 = vunpack.c.h.b16 %v626
  %v2572 = vunpack.c.l.b16 %v627
  %v2573 = vunpack.c.l.b16 %v628
  %v2574 = vunpack.c.h.b16 %v628
  %v2575 = vunpack.c.l.b16 %v629
  %v2576 = vunpack.c.l.b16 %v630
  %v2577 = vunpack.c.h.b16 %v630
  %v2578 = vunpack.c.l.b16 %v631
  %v2579 = vunpack.c.l.b16 %v632
  %v2580 = vunpack.c.h.b16 %v632
  %v2581 = vunpack.c.l.b16 %v633
  %v2582 = vunpack.c.l.b16 %v634
  %v2583 = vunpack.c.h.b16 %v634
  %v2584 = vunpack.c.l.b16 %v635
  %v2585 = vunpack.c.l.b16 %v636
  %v2586 = vunpack.c.h.b16 %v636
  %v2587 = vunpack.c.l.b16 %v637
  %v2588 = vunpack.c.l.b16 %v638
  %v2589 = vunpack.c.h.b16 %v638
  %v2590 = vunpack.c.l.b16 %v639
  %v2591 = vunpack.c.l.b16 %v640
  %v2592 = vunpack.c.h.b16 %v640
  %v2593 = vunpack.c.l.b16 %v641
  %v2594 = vunpack.c.l.b16 %v642
  %v2595 = vunpack.c.h.b16 %v642
  %v2596 = vunpack.c.l.b16 %v643
  %v2597 = vunpack.c.l.b16 %v644
  %v2598 = vunpack.c.h.b16 %v644
  %v2599 = vunpack.c.l.b16 %v645
  %v2600 = vunpack.c.l.b16 %v646
  %v2601 = vunpack.c.h.b16 %v646
  %v2602 = vunpack.c.l.b16 %v647
  %v2603 = vunpack.c.l.b16 %v648
  %v2604 = vunpack.c.h.b16 %v648
  %v2605 = vunpack.c.l.b16 %v649
  %v2606 = vunpack.c.l.b16 %v650
  %v2607 = vunpack.c.h.b16 %v650
  %v2608 = vunpack.c.l.b16 %v651
  %v2609 = vunpack.c.l.b16 %v652
  %v2610 = vunpack.c.h.b16 %v652
  %v2611 = vunpack.c.l.b16 %v653
  %v2612 = vunpack.c.l.b16 %v654
  %v2613 = vunpack.c.h.b16 %v654
  %v2614 = vunpack.c.l.b16 %v655
  %v2615 = vunpack.c.l.b16 %v656
  %v2616 = vunpack.c.h.b16 %v656
  %v2617 = vunpack.c.l.b16 %v657
  %v2618 = vunpack.c.l.b16 %v658
  %v2619 = vunpack.c.h.b16 %v658
  %v2620 = vunpack.c.l.b16 %v659
  %v2621 = vunpack.c.l.b16 %v660
  %v2622 = vunpack.c.h.b16 %v660
  %v2623 = vunpack.c.l.b16 %v661
  %v2624 = vunpack.c.l.b16 %v662
  %v2625 = vunpack.c.h.b16 %v662
  %v2626 = vunpack.c.l.b16 %v663
  %v2627 = vunpack.c.l.b16 %v664
  %v2628 = vunpack.c.h.b16 %v664
  %v2629 = vunpack.c.l.b16 %v665
  %v2630 = vunpack.c.l.b16 %v666
  %v2631 = vunpack.c.h.b16 %v666
  %v2632 = vunpack.c.l.b16 %v667
  %v2633 = vunpack.c.l.b16 %v668
  %v2634 = vunpack.c.h.b16 %v668
  %v2635 = vunpack.c.l.b16 %v669
  %v2636 = vunpack.c.l.b16 %v670
  %v2637 = vunpack.c.h.b16 %v670
  %v2638 = vunpack.c.l.b16 %v671
  %v2639 = vunpack.c.l.b16 %v672
  %v2640 = vunpack.c.h.b16 %v672
  %v2641 = vunpack.c.l.b16 %v673
  %v2642 = vunpack.c.l.b16 %v674
  %v2643 = vunpack.c.h.b16 %v674
  %v2644 = vunpack.c.l.b16 %v675
  %v2645 = vunpack.c.l.b16 %v676
  %v2646 = vunpack.c.h.b16 %v676
  %v2647 = vunpack.c.l.b16 %v677
  %v2648 = vunpack.c.l.b16 %v678
  %v2649 = vunpack.c.h.b16 %v678
  %v2650 = vunpack.c.l.b16 %v679
  %v2651 = vunpack.c.l.b16 %v680
  %v2652 = vunpack.c.h.b16 %v680
  %v2653 = vunpack.c.l.b16 %v681
  %v2654 = vunpack.c.l.b16 %v682
  %v2655 = vunpack.c.h.b16 %v682
  %v2656 = vunpack.c.l.b16 %v683
  %v2657 = vunpack.c.l.b16 %v684
  %v2658 = vunpack.c.h.b16 %v684
  %v2659 = vunpack.c.l.b16 %v685
  %v2660 = vunpack.c.l.b16 %v686
  %v2661 = vunpack.c.h.b16 %v686
  %v2662 = vunpack.c.l.b16 %v687
  %v2663 = vunpack.c.l.b16 %v688
  %v2664 = vunpack.c.h.b16 %v688
  %v2665 = vunpack.c.l.b16 %v689
  %v2666 = vunpack.c.l.b16 %v690
  %v2667 = vunpack.c.h.b16 %v690
  %v2668 = vunpack.c.l.b16 %v691
  %v2669 = vunpack.c.l.b16 %v692
  %v2670 = vunpack.c.h.b16 %v692
  %v2671 = vunpack.c.l.b16 %v693
  %v2672 = vunpack.c.l.b16 %v694
  %v2673 = vunpack.c.h.b16 %v694
  %v2674 = vunpack.c.l.b16 %v695
  %v2675 = vunpack.c.l.b16 %v696
  %v2676 = vunpack.c.h.b16 %v696
  %v2677 = vunpack.c.l.b16 %v697
  %v2678 = vunpack.c.l.b16 %v698
  %v2679 = vunpack.c.h.b16 %v698
  %v2680 = vunpack.c.l.b16 %v699
  %v2681 = vunpack.c.l.b16 %v700
  %v2682 = vunpack.c.h.b16 %v700
  %v2683 = vunpack.c.l.b16 %v701
  %v2684 = vunpack.c.l.b16 %v702
  %v2685 = vunpack.c.h.b16 %v702
  %v2686 = vunpack.c.l.b16 %v703
  %v2687 = vunpack.c.l.b16 %v704
  %v2688 = vunpack.c.h.b16 %v704
  %v2689 = vunpack.c.l.b16 %v705
  %v2690 = vunpack.c.l.b16 %v706
  %v2691 = vunpack.c.h.b16 %v706
  %v2692 = vunpack.c.l.b16 %v707
  %v2693 = vunpack.c.l.b16 %v708
  %v2694 = vunpack.c.h.b16 %v708
  %v2695 = vunpack.c.l.b16 %v709
  %v2696 = vunpack.c.l.b16 %v710
  %v2697 = vunpack.c.h.b16 %v710
  %v2698 = vunpack.c.l.b16 %v711
  %v2699 = vunpack.c.l.b16 %v712
  %v2700 = vunpack.c.h.b16 %v712
  %v2701 = vunpack.c.l.b16 %v713
  %v2702 = vunpack.c.l.b16 %v714
  %v2703 = vunpack.c.h.b16 %v714
  %v2704 = vunpack.c.l.b16 %v715
  %v2705 = vunpack.c.l.b16 %v716
  %v2706 = vunpack.c.h.b16 %v716
  %v2707 = vunpack.c.l.b16 %v717
  %v2708 = vunpack.c.l.b16 %v718
  %v2709 = vunpack.c.h.b16 %v718
  %v2710 = vunpack.c.l.b16 %v719
  %v2711 = vunpack.c.l.b16 %v720
  %v2712 = vunpack.c.h.b16 %v720
  %v2713 = vunpack.c.l.b16 %v721
  %v2714 = vunpack.c.l.b16 %v722
  %v2715 = vunpack.c.h.b16 %v722
  %v2716 = vunpack.c.l.b16 %v723
  %v2717 = vunpack.c.l.b16 %v724
  %v2718 = vunpack.c.h.b16 %v724
  %v2719 = vunpack.c.l.b16 %v725
  %v2720 = vunpack.c.l.b16 %v726
  %v2721 = vunpack.c.h.b16 %v726
  %v2722 = vunpack.c.l.b16 %v727
  %v2723 = vunpack.c.l.b16 %v728
  %v2724 = vunpack.c.h.b16 %v728
  %v2725 = vunpack.c.l.b16 %v729
  %v2726 = vunpack.c.l.b16 %v730
  %v2727 = vunpack.c.h.b16 %v730
  %v2728 = vunpack.c.l.b16 %v731
  %v2729 = vunpack.c.l.b16 %v732
  %v2730 = vunpack.c.h.b16 %v732
  %v2731 = vunpack.c.l.b16 %v733
  %v2732 = vunpack.c.l.b16 %v734
  %v2733 = vunpack.c.h.b16 %v734
  %v2734 = vunpack.c.l.b16 %v735
  %v2735 = vunpack.c.l.b16 %v736
  %v2736 = vunpack.c.h.b16 %v736
  %v2737 = vunpack.c.l.b16 %v737
  %v2738 = vunpack.c.l.b16 %v738
  %v2739 = vunpack.c.h.b16 %v738
  %v2740 = vunpack.c.l.b16 %v739
  %v2741 = vunpack.c.l.b16 %v740
  %v2742 = vunpack.c.h.b16 %v740
  %v2743 = vunpack.c.l.b16 %v741
  %v2744 = vunpack.c.l.b16 %v742
  %v2745 = vunpack.c.h.b16 %v742
  %v2746 = vunpack.c.l.b16 %v743
  %v2747 = vunpack.c.l.b16 %v744
  %v2748 = vunpack.c.h.b16 %v744
  %v2749 = vunpack.c.l.b16 %v745
  %v2750 = vunpack.c.l.b16 %v746
  %v2751 = vunpack.c.h.b16 %v746
  %v2752 = vunpack.c.l.b16 %v747
  %v2753 = vunpack.c.l.b16 %v748
  %v2754 = vunpack.c.h.b16 %v748
  %v2755 = vunpack.c.l.b16 %v749
  %v2756 = vunpack.c.l.b16 %v750
  %v2757 = vunpack.c.h.b16 %v750
  %v2758 = vunpack.c.l.b16 %v751
  %v2759 = vunpack.c.l.b16 %v752
  %v2760 = vunpack.c.h.b16 %v752
  %v2761 = vunpack.c.l.b16 %v753
  %v2762 = vunpack.c.l.b16 %v754
  %v2763 = vunpack.c.h.b16 %v754
  %v2764 = vunpack.c.l.b16 %v755
  %v2765 = vunpack.c.l.b16 %v756
  %v2766 = vunpack.c.h.b16 %v756
  %v2767 = vunpack.c.l.b16 %v757
  %v2768 = vunpack.c.l.b16 %v758
  %v2769 = vunpack.c.h.b16 %v758
  %v2770 = vunpack.c.l.b16 %v759
  %v2771 = vunpack.c.l.b16 %v760
  %v2772 = vunpack.c.h.b16 %v760
  %v2773 = vunpack.c.l.b16 %v761
  %v2774 = vunpack.c.l.b16 %v762
  %v2775 = vunpack.c.h.b16 %v762
  %v2776 = vunpack.c.l.b16 %v763
  %v2777 = vunpack.c.l.b16 %v764
  %v2778 = vunpack.c.h.b16 %v764
  %v2779 = vunpack.c.l.b16 %v765
  %v2780 = vunpack.c.l.b16 %v766
  %v2781 = vunpack.c.h.b16 %v766
  %v2782 = vunpack.c.l.b16 %v767
  %v2783 = vunpack.c.l.b16 %v768
  %v2784 = vunpack.c.h.b16 %v768
  %v2785 = vunpack.c.l.b16 %v769
  %v2786 = vunpack.c.l.b16 %v770
  %v2787 = vunpack.c.h.b16 %v770
  %v2788 = vunpack.c.l.b16 %v771
  %v2789 = vunpack.c.l.b16 %v772
  %v2790 = vunpack.c.h.b16 %v772
  %v2791 = vunpack.c.l.b16 %v773
  %v2792 = vunpack.c.l.b16 %v774
  %v2793 = vunpack.c.h.b16 %v774
  %v2794 = vunpack.c.l.b16 %v775
  %v2795 = vunpack.c.l.b16 %v776
  %v2796 = vunpack.c.h.b16 %v776
  %v2797 = vunpack.c.l.b16 %v777
  %v2798 = vunpack.c.l.b16 %v778
  %v2799 = vunpack.c.h.b16 %v778
  %v2800 = vunpack.c.l.b16 %v779
  %v2801 = vunpack.c.l.b16 %v780
  %v2802 = vunpack.c.h.b16 %v780
  %v2803 = vunpack.c.l.b16 %v781
  %v2804 = vunpack.c.l.b16 %v782
  %v2805 = vunpack.c.h.b16 %v782
  %v2806 = vunpack.c.l.b16 %v783
  %v2807 = vunpack.c.l.b16 %v784
  %v2808 = vunpack.c.h.b16 %v784
  %v2809 = vunpack.c.l.b16 %v785
  %v2810 = vunpack.c.l.b16 %v786
  %v2811 = vunpack.c.h.b16 %v786
  %v2812 = vunpack.c.l.b16 %v787
  %v2813 = vunpack.c.l.b16 %v788
  %v2814 = vunpack.c.h.b16 %v788
  %v2815 = vunpack.c.l.b16 %v789
  %v2816 = vunpack.c.l.b16 %v790
  %v2817 = vunpack.c.h.b16 %v790
  %v2818 = vunpack.c.l.b16 %v791
  %v2819 = vunpack.c.l.b16 %v792
  %v2820 = vunpack.c.h.b16 %v792
  %v2821 = vunpack.c.l.b16 %v793
  %v2822 = vunpack.c.l.b16 %v794
  %v2823 = vunpack.c.h.b16 %v794
  %v2824 = vunpack.c.l.b16 %v795
  %v2825 = vunpack.c.l.b16 %v796
  %v2826 = vunpack.c.h.b16 %v796
  %v2827 = vunpack.c.l.b16 %v797
  %v2828 = vpack.c.b16 %v1751, %v1748
  %v2829 = vpack.c.b16 %v1752, %v1749
  %v2830 = vpack.c.b16 %v1753, %v1750
  %v2831 = vpack.c.b16 %v1757, %v1754
  %v2832 = vpack.c.b16 %v1758, %v1755
  %v2833 = vpack.c.b16 %v1759, %v1756
  %v2834 = vpack.c.b16 %v1763, %v1760
  %v2835 = vpack.c.b16 %v1764, %v1761
  %v2836 = vpack.c.b16 %v1765, %v1762
  %v2837 = vpack.c.b16 %v1769, %v1766
  %v2838 = vpack.c.b16 %v1770, %v1767
  %v2839 = vpack.c.b16 %v1771, %v1768
  %v2840 = vpack.c.b16 %v1775, %v1772
  %v2841 = vpack.c.b16 %v1776, %v1773
  %v2842 = vpack.c.b16 %v1777, %v1774
  %v2843 = vpack.c.b16 %v1781, %v1778
  %v2844 = vpack.c.b16 %v1782, %v1779
  %v2845 = vpack.c.b16 %v1783, %v1780
  %v2846 = vpack.c.b16 %v1787, %v1784
  %v2847 = vpack.c.b16 %v1788, %v1785
  %v2848 = vpack.c.b16 %v1789, %v1786
  %v2849 = vpack.c.b16 %v1793, %v1790
  %v2850 = vpack.c.b16 %v1794, %v1791
  %v2851 = vpack.c.b16 %v1795, %v1792
  %v2852 = vpack.c.b16 %v1799, %v1796
  %v2853 = vpack.c.b16 %v1800, %v1797
  %v2854 = vpack.c.b16 %v1801, %v1798
  %v2855 = vpack.c.b16 %v1805, %v1802
  %v2856 = vpack.c.b16 %v1806, %v1803
  %v2857 = vpack.c.b16 %v1807, %v1804
  %v2858 = vpack.c.b16 %v1811, %v1808
  %v2859 = vpack.c.b16 %v1812, %v1809
  %v2860 = vpack.c.b16 %v1813, %v1810
  %v2861 = vpack.c.b16 %v1817, %v1814
  %v2862 = vpack.c.b16 %v1818, %v1815
  %v2863 = vpack.c.b16 %v1819, %v1816
  %v2864 = vpack.c.b16 %v1823, %v1820
  %v2865 = vpack.c.b16 %v1824, %v1821
  %v2866 = vpack.c.b16 %v1825, %v1822
  %v2867 = vpack.c.b16 %v1829, %v1826
  %v2868 = vpack.c.b16 %v1830, %v1827
  %v2869 = vpack.c.b16 %v1831, %v1828
  %v2870 = vpack.c.b16 %v1835, %v1832
  %v2871 = vpack.c.b16 %v1836, %v1833
  %v2872 = vpack.c.b16 %v1837, %v1834
  %v2873 = vpack.c.b16 %v1841, %v1838
  %v2874 = vpack.c.b16 %v1842, %v1839
  %v2875 = vpack.c.b16 %v1843, %v1840
  %v2876 = vpack.c.b16 %v1847, %v1844
  %v2877 = vpack.c.b16 %v1848, %v1845
  %v2878 = vpack.c.b16 %v1849, %v1846
  %v2879 = vpack.c.b16 %v1853, %v1850
  %v2880 = vpack.c.b16 %v1854, %v1851
  %v2881 = vpack.c.b16 %v1855, %v1852
  %v2882 = vpack.c.b16 %v1859, %v1856
  %v2883 = vpack.c.b16 %v1860, %v1857
  %v2884 = vpack.c.b16 %v1861, %v1858
  %v2885 = vpack.c.b16 %v1865, %v1862
  %v2886 = vpack.c.b16 %v1866, %v1863
  %v2887 = vpack.c.b16 %v1867, %v1864
  %v2888 = vpack.c.b16 %v1871, %v1868
  %v2889 = vpack.c.b16 %v1872, %v1869
  %v2890 = vpack.c.b16 %v1873, %v1870
  %v2891 = vpack.c.b16 %v1877, %v1874
  %v2892 = vpack.c.b16 %v1878, %v1875
  %v2893 = vpack.c.b16 %v1879, %v1876
  %v2894 = vpack.c.b16 %v1883, %v1880
  %v2895 = vpack.c.b16 %v1884, %v1881
  %v2896 = vpack.c.b16 %v1885, %v1882
  %v2897 = vpack.c.b16 %v1889, %v1886
  %v2898 = vpack.c.b16 %v1890, %v1887
  %v2899 = vpack.c.b16 %v1891, %v1888
  %v2900 = vpack.c.b16 %v1895, %v1892
  %v2901 = vpack.c.b16 %v1896, %v1893
  %v2902 = vpack.c.b16 %v1897, %v1894
  %v2903 = vpack.c.b16 %v1901, %v1898
  %v2904 = vpack.c.b16 %v1902, %v1899
  %v2905 = vpack.c.b16 %v1903, %v1900
  %v2906 = vpack.c.b16 %v1907, %v1904
  %v2907 = vpack.c.b16 %v1908, %v1905
  %v2908 = vpack.c.b16 %v1909, %v1906
  %v2909 = vpack.c.b16 %v1913, %v1910
  %v2910 = vpack.c.b16 %v1914, %v1911
  %v2911 = vpack.c.b16 %v1915, %v1912
  %v2912 = vpack.c.b16 %v1919, %v1916
  %v2913 = vpack.c.b16 %v1920, %v1917
  %v2914 = vpack.c.b16 %v1921, %v1918
  %v2915 = vpack.c.b16 %v1925, %v1922
  %v2916 = vpack.c.b16 %v1926, %v1923
  %v2917 = vpack.c.b16 %v1927, %v1924
  %v2918 = vpack.c.b16 %v1931, %v1928
  %v2919 = vpack.c.b16 %v1932, %v1929
  %v2920 = vpack.c.b16 %v1933, %v1930
  %v2921 = vpack.c.b16 %v1937, %v1934
  %v2922 = vpack.c.b16 %v1938, %v1935
  %v2923 = vpack.c.b16 %v1939, %v1936
  %v2924 = vpack.c.b16 %v1943, %v1940
  %v2925 = vpack.c.b16 %v1944, %v1941
  %v2926 = vpack.c.b16 %v1945, %v1942
  %v2927 = vpack.c.b16 %v1949, %v1946
  %v2928 = vpack.c.b16 %v1950, %v1947
  %v2929 = vpack.c.b16 %v1951, %v1948
  %v2930 = vpack.c.b16 %v1955, %v1952
  %v2931 = vpack.c.b16 %v1956, %v1953
  %v2932 = vpack.c.b16 %v1957, %v1954
  %v2933 = vpack.c.b16 %v1961, %v1958
  %v2934 = vpack.c.b16 %v1962, %v1959
  %v2935 = vpack.c.b16 %v1963, %v1960
  %v2936 = vpack.c.b16 %v1967, %v1964
  %v2937 = vpack.c.b16 %v1968, %v1965
  %v2938 = vpack.c.b16 %v1969, %v1966
  %v2939 = vpack.c.b16 %v1973, %v1970
  %v2940 = vpack.c.b16 %v1974, %v1971
  %v2941 = vpack.c.b16 %v1975, %v1972
  %v2942 = vpack.c.b16 %v1979, %v1976
  %v2943 = vpack.c.b16 %v1980, %v1977
  %v2944 = vpack.c.b16 %v1981, %v1978
  %v2945 = vpack.c.b16 %v1985, %v1982
  %v2946 = vpack.c.b16 %v1986, %v1983
  %v2947 = vpack.c.b16 %v1987, %v1984
  %v2948 = vpack.c.b16 %v1991, %v1988
  %v2949 = vpack.c.b16 %v1992, %v1989
  %v2950 = vpack.c.b16 %v1993, %v1990
  %v2951 = vpack.c.b16 %v1997, %v1994
  %v2952 = vpack.c.b16 %v1998, %v1995
  %v2953 = vpack.c.b16 %v1999, %v1996
  %v2954 = vpack.c.b16 %v2003, %v2000
  %v2955 = vpack.c.b16 %v2004, %v2001
  %v2956 = vpack.c.b16 %v2005, %v2002
  %v2957 = vpack.c.b16 %v2009, %v2006
  %v2958 = vpack.c.b16 %v2010, %v2007
  %v2959 = vpack.c.b16 %v2011, %v2008
  %v2960 = vpack.c.b16 %v2015, %v2012
  %v2961 = vpack.c.b16 %v2016, %v2013
  %v2962 = vpack.c.b16 %v2017, %v2014
  %v2963 = vpack.c.b16 %v2021, %v2018
  %v2964 = vpack.c.b16 %v2022, %v2019
  %v2965 = vpack.c.b16 %v2023, %v2020
  %v2966 = vpack.c.b16 %v2027, %v2024
  %v2967 = vpack.c.b16 %v2028, %v2025
  %v2968 = vpack.c.b16 %v2029, %v2026
  %v2969 = vpack.c.b16 %v2033, %v2030
  %v2970 = vpack.c.b16 %v2034, %v2031
  %v2971 = vpack.c.b16 %v2035, %v2032
  %v2972 = vpack.c.b16 %v2039, %v2036
  %v2973 = vpack.c.b16 %v2040, %v2037
  %v2974 = vpack.c.b16 %v2041, %v2038
  %v2975 = vpack.c.b16 %v2045, %v2042
  %v2976 = vpack.c.b16 %v2046, %v2043
  %v2977 = vpack.c.b16 %v2047, %v2044
  %v2978 = vpack.c.b16 %v2051, %v2048
  %v2979 = vpack.c.b16 %v2052, %v2049
  %v2980 = vpack.c.b16 %v2053, %v2050
  %v2981 = vpack.c.b16 %v2057, %v2054
  %v2982 = vpack.c.b16 %v2058, %v2055
  %v2983 = vpack.c.b16 %v2059, %v2056
  %v2984 = vpack.c.b16 %v2063, %v2060
  %v2985 = vpack.c.b16 %v2064, %v2061
  %v2986 = vpack.c.b16 %v2065, %v2062
  %v2987 = vpack.c.b16 %v2069, %v2066
  %v2988 = vpack.c.b16 %v2070, %v2067
  %v2989 = vpack.c.b16 %v2071, %v2068
  %v2990 = vpack.c.b16 %v2075, %v2072
  %v2991 = vpack.c.b16 %v2076, %v2073
  %v2992 = vpack.c.b16 %v2077, %v2074
  %v2993 = vpack.c.b16 %v2081, %v2078
  %v2994 = vpack.c.b16 %v2082, %v2079
  %v2995 = vpack.c.b16 %v2083, %v2080
  %v2996 = vpack.c.b16 %v2087, %v2084
  %v2997 = vpack.c.b16 %v2088, %v2085
  %v2998 = vpack.c.b16 %v2089, %v2086
  %v2999 = vpack.c.b16 %v2093, %v2090
  %v3000 = vpack.c.b16 %v2094, %v2091
  %v3001 = vpack.c.b16 %v2095, %v2092
  %v3002 = vpack.c.b16 %v2099, %v2096
  %v3003 = vpack.c.b16 %v2100, %v2097
  %v3004 = vpack.c.b16 %v2101, %v2098
  %v3005 = vpack.c.b16 %v2105, %v2102
  %v3006 = vpack.c.b16 %v2106, %v2103
  %v3007 = vpack.c.b16 %v2107, %v2104
  %v3008 = vpack.c.b16 %v2111, %v2108
  %v3009 = vpack.c.b16 %v2112, %v2109
  %v3010 = vpack.c.b16 %v2113, %v2110
  %v3011 = vpack.c.b16 %v2117, %v2114
  %v3012 = vpack.c.b16 %v2118, %v2115
  %v3013 = vpack.c.b16 %v2119, %v2116
  %v3014 = vpack.c.b16 %v2123, %v2120
  %v3015 = vpack.c.b16 %v2124, %v2121
  %v3016 = vpack.c.b16 %v2125, %v2122
  %v3017 = vpack.c.b16 %v2129, %v2126
  %v3018 = vpack.c.b16 %v2130, %v2127
  %v3019 = vpack.c.b16 %v2131, %v2128
  %v3020 = vpack.c.b16 %v2135, %v2132
  %v3021 = vpack.c.b16 %v2136, %v2133
  %v3022 = vpack.c.b16 %v2137, %v2134
  %v3023 = vpack.c.b16 %v2141, %v2138
  %v3024 = vpack.c.b16 %v2142, %v2139
  %v3025 = vpack.c.b16 %v2143, %v2140
  %v3026 = vpack.c.b16 %v2147, %v2144
  %v3027 = vpack.c.b16 %v2148, %v2145
  %v3028 = vpack.c.b16 %v2149, %v2146
  %v3029 = vpack.c.b16 %v2153, %v2150
  %v3030 = vpack.c.b16 %v2154, %v2151
  %v3031 = vpack.c.b16 %v2155, %v2152
  %v3032 = vpack.c.b16 %v2159, %v2156
  %v3033 = vpack.c.b16 %v2160, %v2157
  %v3034 = vpack.c.b16 %v2161, %v2158
  %v3035 = vpack.c.b16 %v2165, %v2162
  %v3036 = vpack.c.b16 %v2166, %v2163
  %v3037 = vpack.c.b16 %v2167, %v2164
  %v3038 = vpack.c.b16 %v2171, %v2168
  %v3039 = vpack.c.b16 %v2172, %v2169
  %v3040 = vpack.c.b16 %v2173, %v2170
  %v3041 = vpack.c.b16 %v2177, %v2174
  %v3042 = vpack.c.b16 %v2178, %v2175
  %v3043 = vpack.c.b16 %v2179, %v2176
  %v3044 = vpack.c.b16 %v2183, %v2180
  %v3045 = vpack.c.b16 %v2184, %v2181
  %v3046 = vpack.c.b16 %v2185, %v2182
  %v3047 = vpack.c.b16 %v2189, %v2186
  %v3048 = vpack.c.b16 %v2190, %v2187
  %v3049 = vpack.c.b16 %v2191, %v2188
  %v3050 = vpack.c.b16 %v2195, %v2192
  %v3051 = vpack.c.b16 %v2196, %v2193
  %v3052 = vpack.c.b16 %v2197, %v2194
  %v3053 = vpack.c.b16 %v2201, %v2198
  %v3054 = vpack.c.b16 %v2202, %v2199
  %v3055 = vpack.c.b16 %v2203, %v2200
  %v3056 = vpack.c.b16 %v2207, %v2204
  %v3057 = vpack.c.b16 %v2208, %v2205
  %v3058 = vpack.c.b16 %v2209, %v2206
  %v3059 = vpack.c.b16 %v2213, %v2210
  %v3060 = vpack.c.b16 %v2214, %v2211
  %v3061 = vpack.c.b16 %v2215, %v2212
  %v3062 = vpack.c.b16 %v2219, %v2216
  %v3063 = vpack.c.b16 %v2220, %v2217
  %v3064 = vpack.c.b16 %v2221, %v2218
  %v3065 = vpack.c.b16 %v2225, %v2222
  %v3066 = vpack.c.b16 %v2226, %v2223
  %v3067 = vpack.c.b16 %v2227, %v2224
  %v3068 = vpack.c.b16 %v2231, %v2228
  %v3069 = vpack.c.b16 %v2232, %v2229
  %v3070 = vpack.c.b16 %v2233, %v2230
  %v3071 = vpack.c.b16 %v2237, %v2234
  %v3072 = vpack.c.b16 %v2238, %v2235
  %v3073 = vpack.c.b16 %v2239, %v2236
  %v3074 = vpack.c.b16 %v2243, %v2240
  %v3075 = vpack.c.b16 %v2244, %v2241
  %v3076 = vpack.c.b16 %v2245, %v2242
  %v3077 = vpack.c.b16 %v2249, %v2246
  %v3078 = vpack.c.b16 %v2250, %v2247
  %v3079 = vpack.c.b16 %v2251, %v2248
  %v3080 = vpack.c.b16 %v2255, %v2252
  %v3081 = vpack.c.b16 %v2256, %v2253
  %v3082 = vpack.c.b16 %v2257, %v2254
  %v3083 = vpack.c.b16 %v2261, %v2258
  %v3084 = vpack.c.b16 %v2262, %v2259
  %v3085 = vpack.c.b16 %v2263, %v2260
  %v3086 = vpack.c.b16 %v2267, %v2264
  %v3087 = vpack.c.b16 %v2268, %v2265
  %v3088 = vpack.c.b16 %v2269, %v2266
  %v3089 = vpack.c.b16 %v2273, %v2270
  %v3090 = vpack.c.b16 %v2274, %v2271
  %v3091 = vpack.c.b16 %v2275, %v2272
  %v3092 = vpack.c.b16 %v2279, %v2276
  %v3093 = vpack.c.b16 %v2280, %v2277
  %v3094 = vpack.c.b16 %v2281, %v2278
  %v3095 = vpack.c.b16 %v2285, %v2282
  %v3096 = vpack.c.b16 %v2286, %v2283
  %v3097 = vpack.c.b16 %v2287, %v2284
  %v3098 = vpack.c.b16 %v2291, %v2288
  %v3099 = vpack.c.b16 %v2292, %v2289
  %v3100 = vpack.c.b16 %v2293, %v2290
  %v3101 = vpack.c.b16 %v2297, %v2294
  %v3102 = vpack.c.b16 %v2298, %v2295
  %v3103 = vpack.c.b16 %v2299, %v2296
  %v3104 = vpack.c.b16 %v2303, %v2300
  %v3105 = vpack.c.b16 %v2304, %v2301
  %v3106 = vpack.c.b16 %v2305, %v2302
  %v3107 = vpack.c.b16 %v2309, %v2306
  %v3108 = vpack.c.b16 %v2310, %v2307
  %v3109 = vpack.c.b16 %v2311, %v2308
  %v3110 = vpack.c.b16 %v2315, %v2312
  %v3111 = vpack.c.b16 %v2316, %v2313
  %v3112 = vpack.c.b16 %v2317, %v2314
  %v3113 = vpack.c.b16 %v2321, %v2318
  %v3114 = vpack.c.b16 %v2322, %v2319
  %v3115 = vpack.c.b16 %v2323, %v2320
  %v3116 = vpack.c.b16 %v2327, %v2324
  %v3117 = vpack.c.b16 %v2328, %v2325
  %v3118 = vpack.c.b16 %v2329, %v2326
  %v3119 = vpack.c.b16 %v2333, %v2330
  %v3120 = vpack.c.b16 %v2334, %v2331
  %v3121 = vpack.c.b16 %v2335, %v2332
  %v3122 = vpack.c.b16 %v2339, %v2336
  %v3123 = vpack.c.b16 %v2340, %v2337
  %v3124 = vpack.c.b16 %v2341, %v2338
  %v3125 = vpack.c.b16 %v2345, %v2342
  %v3126 = vpack.c.b16 %v2346, %v2343
  %v3127 = vpack.c.b16 %v2347, %v2344
  %v3128 = vpack.c.b16 %v2351, %v2348
  %v3129 = vpack.c.b16 %v2352, %v2349
  %v3130 = vpack.c.b16 %v2353, %v2350
  %v3131 = vpack.c.b16 %v2357, %v2354
  %v3132 = vpack.c.b16 %v2358, %v2355
  %v3133 = vpack.c.b16 %v2359, %v2356
  %v3134 = vpack.c.b16 %v2363, %v2360
  %v3135 = vpack.c.b16 %v2364, %v2361
  %v3136 = vpack.c.b16 %v2365, %v2362
  %v3137 = vpack.c.b16 %v2369, %v2366
  %v3138 = vpack.c.b16 %v2370, %v2367
  %v3139 = vpack.c.b16 %v2371, %v2368
  %v3140 = vpack.c.b16 %v2375, %v2372
  %v3141 = vpack.c.b16 %v2376, %v2373
  %v3142 = vpack.c.b16 %v2377, %v2374
  %v3143 = vpack.c.b16 %v2381, %v2378
  %v3144 = vpack.c.b16 %v2382, %v2379
  %v3145 = vpack.c.b16 %v2383, %v2380
  %v3146 = vpack.c.b16 %v2387, %v2384
  %v3147 = vpack.c.b16 %v2388, %v2385
  %v3148 = vpack.c.b16 %v2389, %v2386
  %v3149 = vpack.c.b16 %v2393, %v2390
  %v3150 = vpack.c.b16 %v2394, %v2391
  %v3151 = vpack.c.b16 %v2395, %v2392
  %v3152 = vpack.c.b16 %v2399, %v2396
  %v3153 = vpack.c.b16 %v2400, %v2397
  %v3154 = vpack.c.b16 %v2401, %v2398
  %v3155 = vpack.c.b16 %v2405, %v2402
  %v3156 = vpack.c.b16 %v2406, %v2403
  %v3157 = vpack.c.b16 %v2407, %v2404
  %v3158 = vpack.c.b16 %v2411, %v2408
  %v3159 = vpack.c.b16 %v2412, %v2409
  %v3160 = vpack.c.b16 %v2413, %v2410
  %v3161 = vpack.c.b16 %v2417, %v2414
  %v3162 = vpack.c.b16 %v2418, %v2415
  %v3163 = vpack.c.b16 %v2419, %v2416
  %v3164 = vpack.c.b16 %v2423, %v2420
  %v3165 = vpack.c.b16 %v2424, %v2421
  %v3166 = vpack.c.b16 %v2425, %v2422
  %v3167 = vpack.c.b16 %v2429, %v2426
  %v3168 = vpack.c.b16 %v2430, %v2427
  %v3169 = vpack.c.b16 %v2431, %v2428
  %v3170 = vpack.c.b16 %v2435, %v2432
  %v3171 = vpack.c.b16 %v2436, %v2433
  %v3172 = vpack.c.b16 %v2437, %v2434
  %v3173 = vpack.c.b16 %v2441, %v2438
  %v3174 = vpack.c.b16 %v2442, %v2439
  %v3175 = vpack.c.b16 %v2443, %v2440
  %v3176 = vpack.c.b16 %v2447, %v2444
  %v3177 = vpack.c.b16 %v2448, %v2445
  %v3178 = vpack.c.b16 %v2449, %v2446
  %v3179 = vpack.c.b16 %v2453, %v2450
  %v3180 = vpack.c.b16 %v2454, %v2451
  %v3181 = vpack.c.b16 %v2455, %v2452
  %v3182 = vpack.c.b16 %v2459, %v2456
  %v3183 = vpack.c.b16 %v2460, %v2457
  %v3184 = vpack.c.b16 %v2461, %v2458
  %v3185 = vpack.c.b16 %v2465, %v2462
  %v3186 = vpack.c.b16 %v2466, %v2463
  %v3187 = vpack.c.b16 %v2467, %v2464
  %v3188 = vpack.c.b16 %v2471, %v2468
  %v3189 = vpack.c.b16 %v2472, %v2469
  %v3190 = vpack.c.b16 %v2473, %v2470
  %v3191 = vpack.c.b16 %v2477, %v2474
  %v3192 = vpack.c.b16 %v2478, %v2475
  %v3193 = vpack.c.b16 %v2479, %v2476
  %v3194 = vpack.c.b16 %v2483, %v2480
  %v3195 = vpack.c.b16 %v2484, %v2481
  %v3196 = vpack.c.b16 %v2485, %v2482
  %v3197 = vpack.c.b16 %v2489, %v2486
  %v3198 = vpack.c.b16 %v2490, %v2487
  %v3199 = vpack.c.b16 %v2491, %v2488
  %v3200 = vpack.c.b16 %v2495, %v2492
  %v3201 = vpack.c.b16 %v2496, %v2493
  %v3202 = vpack.c.b16 %v2497, %v2494
  %v3203 = vpack.c.b16 %v2501, %v2498
  %v3204 = vpack.c.b16 %v2502, %v2499
  %v3205 = vpack.c.b16 %v2503, %v2500
  %v3206 = vpack.c.b16 %v2507, %v2504
  %v3207 = vpack.c.b16 %v2508, %v2505
  %v3208 = vpack.c.b16 %v2509, %v2506
  %v3209 = vpack.c.b16 %v2513, %v2510
  %v3210 = vpack.c.b16 %v2514, %v2511
  %v3211 = vpack.c.b16 %v2515, %v2512
  %v3212 = vpack.c.b16 %v2519, %v2516
  %v3213 = vpack.c.b16 %v2520, %v2517
  %v3214 = vpack.c.b16 %v2521, %v2518
  %v3215 = vpack.c.b16 %v2525, %v2522
  %v3216 = vpack.c.b16 %v2526, %v2523
  %v3217 = vpack.c.b16 %v2527, %v2524
  %v3218 = vpack.c.b16 %v2531, %v2528
  %v3219 = vpack.c.b16 %v2532, %v2529
  %v3220 = vpack.c.b16 %v2533, %v2530
  %v3221 = vpack.c.b16 %v2537, %v2534
  %v3222 = vpack.c.b16 %v2538, %v2535
  %v3223 = vpack.c.b16 %v2539, %v2536
  %v3224 = vpack.c.b16 %v2543, %v2540
  %v3225 = vpack.c.b16 %v2544, %v2541
  %v3226 = vpack.c.b16 %v2545, %v2542
  %v3227 = vpack.c.b16 %v2549, %v2546
  %v3228 = vpack.c.b16 %v2550, %v2547
  %v3229 = vpack.c.b16 %v2551, %v2548
  %v3230 = vpack.c.b16 %v2555, %v2552
  %v3231 = vpack.c.b16 %v2556, %v2553
  %v3232 = vpack.c.b16 %v2557, %v2554
  %v3233 = vpack.c.b16 %v2561, %v2558
  %v3234 = vpack.c.b16 %v2562, %v2559
  %v3235 = vpack.c.b16 %v2563, %v2560
  %v3236 = vpack.c.b16 %v2567, %v2564
  %v3237 = vpack.c.b16 %v2568, %v2565
  %v3238 = vpack.c.b16 %v2569, %v2566
  %v3239 = vpack.c.b16 %v2573, %v2570
  %v3240 = vpack.c.b16 %v2574, %v2571
  %v3241 = vpack.c.b16 %v2575, %v2572
  %v3242 = vpack.c.b16 %v2579, %v2576
  %v3243 = vpack.c.b16 %v2580, %v2577
  %v3244 = vpack.c.b16 %v2581, %v2578
  %v3245 = vpack.c.b16 %v2585, %v2582
  %v3246 = vpack.c.b16 %v2586, %v2583
  %v3247 = vpack.c.b16 %v2587, %v2584
  %v3248 = vpack.c.b16 %v2591, %v2588
  %v3249 = vpack.c.b16 %v2592, %v2589
  %v3250 = vpack.c.b16 %v2593, %v2590
  %v3251 = vpack.c.b16 %v2597, %v2594
  %v3252 = vpack.c.b16 %v2598, %v2595
  %v3253 = vpack.c.b16 %v2599, %v2596
  %v3254 = vpack.c.b16 %v2603, %v2600
  %v3255 = vpack.c.b16 %v2604, %v2601
  %v3256 = vpack.c.b16 %v2605, %v2602
  %v3257 = vpack.c.b16 %v2609, %v2606
  %v3258 = vpack.c.b16 %v2610, %v2607
  %v3259 = vpack.c.b16 %v2611, %v2608
  %v3260 = vpack.c.b16 %v2615, %v2612
  %v3261 = vpack.c.b16 %v2616, %v2613
  %v3262 = vpack.c.b16 %v2617, %v2614
  %v3263 = vpack.c.b16 %v2621, %v2618
  %v3264 = vpack.c.b16 %v2622, %v2619
  %v3265 = vpack.c.b16 %v2623, %v2620
  %v3266 = vpack.c.b16 %v2627, %v2624
  %v3267 = vpack.c.b16 %v2628, %v2625
  %v3268 = vpack.c.b16 %v2629, %v2626
  %v3269 = vpack.c.b16 %v2633, %v2630
  %v3270 = vpack.c.b16 %v2634, %v2631
  %v3271 = vpack.c.b16 %v2635, %v2632
  %v3272 = vpack.c.b16 %v2639, %v2636
  %v3273 = vpack.c.b16 %v2640, %v2637
  %v3274 = vpack.c.b16 %v2641, %v2638
  %v3275 = vpack.c.b16 %v2645, %v2642
  %v3276 = vpack.c.b16 %v2646, %v2643
  %v3277 = vpack.c.b16 %v2647, %v2644
  %v3278 = vpack.c.b16 %v2651, %v2648
  %v3279 = vpack.c.b16 %v2652, %v2649
  %v3280 = vpack.c.b16 %v2653, %v2650
  %v3281 = vpack.c.b16 %v2657, %v2654
  %v3282 = vpack.c.b16 %v2658, %v2655
  %v3283 = vpack.c.b16 %v2659, %v2656
  %v3284 = vpack.c.b16 %v2663, %v2660
  %v3285 = vpack.c.b16 %v2664, %v2661
  %v3286 = vpack.c.b16 %v2665, %v2662
  %v3287 = vpack.c.b16 %v2669, %v2666
  %v3288 = vpack.c.b16 %v2670, %v2667
  %v3289 = vpack.c.b16 %v2671, %v2668
  %v3290 = vpack.c.b16 %v2675, %v2672
  %v3291 = vpack.c.b16 %v2676, %v2673
  %v3292 = vpack.c.b16 %v2677, %v2674
  %v3293 = vpack.c.b16 %v2681, %v2678
  %v3294 = vpack.c.b16 %v2682, %v2679
  %v3295 = vpack.c.b16 %v2683, %v2680
  %v3296 = vpack.c.b16 %v2687, %v2684
  %v3297 = vpack.c.b16 %v2688, %v2685
  %v3298 = vpack.c.b16 %v2689, %v2686
  %v3299 = vpack.c.b16 %v2693, %v2690
  %v3300 = vpack.c.b16 %v2694, %v2691
  %v3301 = vpack.c.b16 %v2695, %v2692
  %v3302 = vpack.c.b16 %v2699, %v2696
  %v3303 = vpack.c.b16 %v2700, %v2697
  %v3304 = vpack.c.b16 %v2701, %v2698
  %v3305 = vpack.c.b16 %v2705, %v2702
  %v3306 = vpack.c.b16 %v2706, %v2703
  %v3307 = vpack.c.b16 %v2707, %v2704
  %v3308 = vpack.c.b16 %v2711, %v2708
  %v3309 = vpack.c.b16 %v2712, %v2709
  %v3310 = vpack.c.b16 %v2713, %v2710
  %v3311 = vpack.c.b16 %v2717, %v2714
  %v3312 = vpack.c.b16 %v2718, %v2715
  %v3313 = vpack.c.b16 %v2719, %v2716
  %v3314 = vpack.c.b16 %v2723, %v2720
  %v3315 = vpack.c.b16 %v2724, %v2721
  %v3316 = vpack.c.b16 %v2725, %v2722
  %v3317 = vpack.c.b16 %v2729, %v2726
  %v3318 = vpack.c.b16 %v2730, %v2727
  %v3319 = vpack.c.b16 %v2731, %v2728
  %v3320 = vpack.c.b16 %v2735, %v2732
  %v3321 = vpack.c.b16 %v2736, %v2733
  %v3322 = vpack.c.b16 %v2737, %v2734
  %v3323 = vpack.c.b16 %v2741, %v2738
  %v3324 = vpack.c.b16 %v2742, %v2739
  %v3325 = vpack.c.b16 %v2743, %v2740
  %v3326 = vpack.c.b16 %v2747, %v2744
  %v3327 = vpack.c.b16 %v2748, %v2745
  %v3328 = vpack.c.b16 %v2749, %v2746
  %v3329 = vpack.c.b16 %v2753, %v2750
  %v3330 = vpack.c.b16 %v2754, %v2751
  %v3331 = vpack.c.b16 %v2755, %v2752
  %v3332 = vpack.c.b16 %v2759, %v2756
  %v3333 = vpack.c.b16 %v2760, %v2757
  %v3334 = vpack.c.b16 %v2761, %v2758
  %v3335 = vpack.c.b16 %v2765, %v2762
  %v3336 = vpack.c.b16 %v2766, %v2763
  %v3337 = vpack.c.b16 %v2767, %v2764
  %v3338 = vpack.c.b16 %v2771, %v2768
  %v3339 = vpack.c.b16 %v2772, %v2769
  %v3340 = vpack.c.b16 %v2773, %v2770
  %v3341 = vpack.c.b16 %v2777, %v2774
  %v3342 = vpack.c.b16 %v2778, %v2775
  %v3343 = vpack.c.b16 %v2779, %v2776
  %v3344 = vpack.c.b16 %v2783, %v2780
  %v3345 = vpack.c.b16 %v2784, %v2781
  %v3346 = vpack.c.b16 %v2785, %v2782
  %v3347 = vpack.c.b16 %v2789, %v2786
  %v3348 = vpack.c.b16 %v2790, %v2787
  %v3349 = vpack.c.b16 %v2791, %v2788
  %v3350 = vpack.c.b16 %v2795, %v2792
  %v3351 = vpack.c.b16 %v2796, %v2793
  %v3352 = vpack.c.b16 %v2797, %v2794
  %v3353 = vpack.c.b16 %v2801, %v2798
  %v3354 = vpack.c.b16 %v2802, %v2799
  %v3355 = vpack.c.b16 %v2803, %v2800
  %v3356 = vpack.c.b16 %v2807, %v2804
  %v3357 = vpack.c.b16 %v2808, %v2805
  %v3358 = vpack.c.b16 %v2809, %v2806
  %v3359 = vpack.c.b16 %v2813, %v2810
  %v3360 = vpack.c.b16 %v2814, %v2811
  %v3361 = vpack.c.b16 %v2815, %v2812
  %v3362 = vpack.c.b16 %v2819, %v2816
  %v3363 = vpack.c.b16 %v2820, %v2817
  %v3364 = vpack.c.b16 %v2821, %v2818
  %v3365 = vpack.c.b16 %v2825, %v2822
  %v3366 = vpack.c.b16 %v2826, %v2823
  %v3367 = vpack.c.b16 %v2827, %v2824
  %vm3908 = vcmask 523264
  %v3910 = vsel %vm3908, %v960, 0
  %v3913 = vsel %vm3908, %v983, 0
  %3915 = vmatpush.bf16.msra.mxu0 %v2849
  %3916 = vmatpush.bf16.msra.mxu0 %v2846
  %3917 = vmatpush.bf16.msra.mxu0 %v2843
  %3918 = vmatpush.bf16.msra.mxu0 %v2840
  %3919 = vmatpush.bf16.msra.mxu0 %v2837
  %3920 = vmatpush.bf16.msra.mxu0 %v2834
  %3921 = vmatpush.bf16.msra.mxu0 %v2831
  %3922 = vmatpush.bf16.msra.mxu0 %v2828
  %3923 = vmatmul.bf16.gmra.mxu0 %v938
  %v3924 = vpop.f32.mrf.mxu0
  %v3925 = vadd.f32 0.0, %v3924
  %v3926 = vpop.f32.mrf.mxu0
  %v3927 = vadd.f32 0.0, %v3926
  %3928 = vmatmul.bf16.gmra.mxu0 %v961
  %v3929 = vpop.f32.mrf.mxu0
  %v3930 = vadd.f32 0.0, %v3929
  %v3931 = vpop.f32.mrf.mxu0
  %v3932 = vadd.f32 0.0, %v3931
  %3933 = vdwg.mxu0
  %3934 = vmatpush.bf16.msra.mxu0 %v2873
  %3935 = vmatpush.bf16.msra.mxu0 %v2870
  %3936 = vmatpush.bf16.msra.mxu0 %v2867
  %3937 = vmatpush.bf16.msra.mxu0 %v2864
  %3938 = vmatpush.bf16.msra.mxu0 %v2861
  %3939 = vmatpush.bf16.msra.mxu0 %v2858
  %3940 = vmatpush.bf16.msra.mxu0 %v2855
  %3941 = vmatpush.bf16.msra.mxu0 %v2852
  %3942 = vmatmul.bf16.gmra.mxu0 %v939
  %v3943 = vpop.f32.mrf.mxu0
  %v3944 = vadd.f32 %v3925, %v3943
  %v3945 = vpop.f32.mrf.mxu0
  %v3946 = vadd.f32 %v3927, %v3945
  %3947 = vmatmul.bf16.gmra.mxu0 %v962
  %v3948 = vpop.f32.mrf.mxu0
  %v3949 = vadd.f32 %v3930, %v3948
  %v3950 = vpop.f32.mrf.mxu0
  %v3951 = vadd.f32 %v3932, %v3950
  %3952 = vdwg.mxu0
  %3953 = vmatpush.bf16.msra.mxu0 %v2897
  %3954 = vmatpush.bf16.msra.mxu0 %v2894
  %3955 = vmatpush.bf16.msra.mxu0 %v2891
  %3956 = vmatpush.bf16.msra.mxu0 %v2888
  %3957 = vmatpush.bf16.msra.mxu0 %v2885
  %3958 = vmatpush.bf16.msra.mxu0 %v2882
  %3959 = vmatpush.bf16.msra.mxu0 %v2879
  %3960 = vmatpush.bf16.msra.mxu0 %v2876
  %3961 = vmatmul.bf16.gmra.mxu0 %v940
  %v3962 = vpop.f32.mrf.mxu0
  %v3963 = vadd.f32 %v3944, %v3962
  %v3964 = vpop.f32.mrf.mxu0
  %v3965 = vadd.f32 %v3946, %v3964
  %3966 = vmatmul.bf16.gmra.mxu0 %v963
  %v3967 = vpop.f32.mrf.mxu0
  %v3968 = vadd.f32 %v3949, %v3967
  %v3969 = vpop.f32.mrf.mxu0
  %v3970 = vadd.f32 %v3951, %v3969
  %3971 = vdwg.mxu0
  %3972 = vmatpush.bf16.msra.mxu0 %v2921
  %3973 = vmatpush.bf16.msra.mxu0 %v2918
  %3974 = vmatpush.bf16.msra.mxu0 %v2915
  %3975 = vmatpush.bf16.msra.mxu0 %v2912
  %3976 = vmatpush.bf16.msra.mxu0 %v2909
  %3977 = vmatpush.bf16.msra.mxu0 %v2906
  %3978 = vmatpush.bf16.msra.mxu0 %v2903
  %3979 = vmatpush.bf16.msra.mxu0 %v2900
  %3980 = vmatmul.bf16.gmra.mxu0 %v941
  %v3981 = vpop.f32.mrf.mxu0
  %v3982 = vadd.f32 %v3963, %v3981
  %v3983 = vpop.f32.mrf.mxu0
  %v3984 = vadd.f32 %v3965, %v3983
  %3985 = vmatmul.bf16.gmra.mxu0 %v964
  %v3986 = vpop.f32.mrf.mxu0
  %v3987 = vadd.f32 %v3968, %v3986
  %v3988 = vpop.f32.mrf.mxu0
  %v3989 = vadd.f32 %v3970, %v3988
  %3990 = vdwg.mxu0
  %3991 = vmatpush.bf16.msra.mxu0 %v2945
  %3992 = vmatpush.bf16.msra.mxu0 %v2942
  %3993 = vmatpush.bf16.msra.mxu0 %v2939
  %3994 = vmatpush.bf16.msra.mxu0 %v2936
  %3995 = vmatpush.bf16.msra.mxu0 %v2933
  %3996 = vmatpush.bf16.msra.mxu0 %v2930
  %3997 = vmatpush.bf16.msra.mxu0 %v2927
  %3998 = vmatpush.bf16.msra.mxu0 %v2924
  %3999 = vmatmul.bf16.gmra.mxu0 %v942
  %v4000 = vpop.f32.mrf.mxu0
  %v4001 = vadd.f32 %v3982, %v4000
  %v4002 = vpop.f32.mrf.mxu0
  %v4003 = vadd.f32 %v3984, %v4002
  %4004 = vmatmul.bf16.gmra.mxu0 %v965
  %v4005 = vpop.f32.mrf.mxu0
  %v4006 = vadd.f32 %v3987, %v4005
  %v4007 = vpop.f32.mrf.mxu0
  %v4008 = vadd.f32 %v3989, %v4007
  %4009 = vdwg.mxu0
  %4010 = vmatpush.bf16.msra.mxu0 %v2969
  %4011 = vmatpush.bf16.msra.mxu0 %v2966
  %4012 = vmatpush.bf16.msra.mxu0 %v2963
  %4013 = vmatpush.bf16.msra.mxu0 %v2960
  %4014 = vmatpush.bf16.msra.mxu0 %v2957
  %4015 = vmatpush.bf16.msra.mxu0 %v2954
  %4016 = vmatpush.bf16.msra.mxu0 %v2951
  %4017 = vmatpush.bf16.msra.mxu0 %v2948
  %4018 = vmatmul.bf16.gmra.mxu0 %v943
  %v4019 = vpop.f32.mrf.mxu0
  %v4020 = vadd.f32 %v4001, %v4019
  %v4021 = vpop.f32.mrf.mxu0
  %v4022 = vadd.f32 %v4003, %v4021
  %4023 = vmatmul.bf16.gmra.mxu0 %v966
  %v4024 = vpop.f32.mrf.mxu0
  %v4025 = vadd.f32 %v4006, %v4024
  %v4026 = vpop.f32.mrf.mxu0
  %v4027 = vadd.f32 %v4008, %v4026
  %4028 = vdwg.mxu0
  %4029 = vmatpush.bf16.msra.mxu0 %v2993
  %4030 = vmatpush.bf16.msra.mxu0 %v2990
  %4031 = vmatpush.bf16.msra.mxu0 %v2987
  %4032 = vmatpush.bf16.msra.mxu0 %v2984
  %4033 = vmatpush.bf16.msra.mxu0 %v2981
  %4034 = vmatpush.bf16.msra.mxu0 %v2978
  %4035 = vmatpush.bf16.msra.mxu0 %v2975
  %4036 = vmatpush.bf16.msra.mxu0 %v2972
  %4037 = vmatmul.bf16.gmra.mxu0 %v944
  %v4038 = vpop.f32.mrf.mxu0
  %v4039 = vadd.f32 %v4020, %v4038
  %v4040 = vpop.f32.mrf.mxu0
  %v4041 = vadd.f32 %v4022, %v4040
  %4042 = vmatmul.bf16.gmra.mxu0 %v967
  %v4043 = vpop.f32.mrf.mxu0
  %v4044 = vadd.f32 %v4025, %v4043
  %v4045 = vpop.f32.mrf.mxu0
  %v4046 = vadd.f32 %v4027, %v4045
  %4047 = vdwg.mxu0
  %4048 = vmatpush.bf16.msra.mxu0 %v3017
  %4049 = vmatpush.bf16.msra.mxu0 %v3014
  %4050 = vmatpush.bf16.msra.mxu0 %v3011
  %4051 = vmatpush.bf16.msra.mxu0 %v3008
  %4052 = vmatpush.bf16.msra.mxu0 %v3005
  %4053 = vmatpush.bf16.msra.mxu0 %v3002
  %4054 = vmatpush.bf16.msra.mxu0 %v2999
  %4055 = vmatpush.bf16.msra.mxu0 %v2996
  %4056 = vmatmul.bf16.gmra.mxu0 %v945
  %v4057 = vpop.f32.mrf.mxu0
  %v4058 = vadd.f32 %v4039, %v4057
  %v4059 = vpop.f32.mrf.mxu0
  %v4060 = vadd.f32 %v4041, %v4059
  %4061 = vmatmul.bf16.gmra.mxu0 %v968
  %v4062 = vpop.f32.mrf.mxu0
  %v4063 = vadd.f32 %v4044, %v4062
  %v4064 = vpop.f32.mrf.mxu0
  %v4065 = vadd.f32 %v4046, %v4064
  %4066 = vdwg.mxu0
  %4067 = vmatpush.bf16.msra.mxu0 %v3041
  %4068 = vmatpush.bf16.msra.mxu0 %v3038
  %4069 = vmatpush.bf16.msra.mxu0 %v3035
  %4070 = vmatpush.bf16.msra.mxu0 %v3032
  %4071 = vmatpush.bf16.msra.mxu0 %v3029
  %4072 = vmatpush.bf16.msra.mxu0 %v3026
  %4073 = vmatpush.bf16.msra.mxu0 %v3023
  %4074 = vmatpush.bf16.msra.mxu0 %v3020
  %4075 = vmatmul.bf16.gmra.mxu0 %v946
  %v4076 = vpop.f32.mrf.mxu0
  %v4077 = vadd.f32 %v4058, %v4076
  %v4078 = vpop.f32.mrf.mxu0
  %v4079 = vadd.f32 %v4060, %v4078
  %4080 = vmatmul.bf16.gmra.mxu0 %v969
  %v4081 = vpop.f32.mrf.mxu0
  %v4082 = vadd.f32 %v4063, %v4081
  %v4083 = vpop.f32.mrf.mxu0
  %v4084 = vadd.f32 %v4065, %v4083
  %4085 = vdwg.mxu0
  %4086 = vmatpush.bf16.msra.mxu0 %v3065
  %4087 = vmatpush.bf16.msra.mxu0 %v3062
  %4088 = vmatpush.bf16.msra.mxu0 %v3059
  %4089 = vmatpush.bf16.msra.mxu0 %v3056
  %4090 = vmatpush.bf16.msra.mxu0 %v3053
  %4091 = vmatpush.bf16.msra.mxu0 %v3050
  %4092 = vmatpush.bf16.msra.mxu0 %v3047
  %4093 = vmatpush.bf16.msra.mxu0 %v3044
  %4094 = vmatmul.bf16.gmra.mxu0 %v947
  %v4095 = vpop.f32.mrf.mxu0
  %v4096 = vadd.f32 %v4077, %v4095
  %v4097 = vpop.f32.mrf.mxu0
  %v4098 = vadd.f32 %v4079, %v4097
  %4099 = vmatmul.bf16.gmra.mxu0 %v970
  %v4100 = vpop.f32.mrf.mxu0
  %v4101 = vadd.f32 %v4082, %v4100
  %v4102 = vpop.f32.mrf.mxu0
  %v4103 = vadd.f32 %v4084, %v4102
  %4104 = vdwg.mxu0
  %4105 = vmatpush.bf16.msra.mxu0 %v3089
  %4106 = vmatpush.bf16.msra.mxu0 %v3086
  %4107 = vmatpush.bf16.msra.mxu0 %v3083
  %4108 = vmatpush.bf16.msra.mxu0 %v3080
  %4109 = vmatpush.bf16.msra.mxu0 %v3077
  %4110 = vmatpush.bf16.msra.mxu0 %v3074
  %4111 = vmatpush.bf16.msra.mxu0 %v3071
  %4112 = vmatpush.bf16.msra.mxu0 %v3068
  %4113 = vmatmul.bf16.gmra.mxu0 %v948
  %v4114 = vpop.f32.mrf.mxu0
  %v4115 = vadd.f32 %v4096, %v4114
  %v4116 = vpop.f32.mrf.mxu0
  %v4117 = vadd.f32 %v4098, %v4116
  %4118 = vmatmul.bf16.gmra.mxu0 %v971
  %v4119 = vpop.f32.mrf.mxu0
  %v4120 = vadd.f32 %v4101, %v4119
  %v4121 = vpop.f32.mrf.mxu0
  %v4122 = vadd.f32 %v4103, %v4121
  %4123 = vdwg.mxu0
  %4124 = vmatpush.bf16.msra.mxu0 %v3113
  %4125 = vmatpush.bf16.msra.mxu0 %v3110
  %4126 = vmatpush.bf16.msra.mxu0 %v3107
  %4127 = vmatpush.bf16.msra.mxu0 %v3104
  %4128 = vmatpush.bf16.msra.mxu0 %v3101
  %4129 = vmatpush.bf16.msra.mxu0 %v3098
  %4130 = vmatpush.bf16.msra.mxu0 %v3095
  %4131 = vmatpush.bf16.msra.mxu0 %v3092
  %4132 = vmatmul.bf16.gmra.mxu0 %v949
  %v4133 = vpop.f32.mrf.mxu0
  %v4134 = vadd.f32 %v4115, %v4133
  %v4135 = vpop.f32.mrf.mxu0
  %v4136 = vadd.f32 %v4117, %v4135
  %4137 = vmatmul.bf16.gmra.mxu0 %v972
  %v4138 = vpop.f32.mrf.mxu0
  %v4139 = vadd.f32 %v4120, %v4138
  %v4140 = vpop.f32.mrf.mxu0
  %v4141 = vadd.f32 %v4122, %v4140
  %4142 = vdwg.mxu0
  %4143 = vmatpush.bf16.msra.mxu0 %v3137
  %4144 = vmatpush.bf16.msra.mxu0 %v3134
  %4145 = vmatpush.bf16.msra.mxu0 %v3131
  %4146 = vmatpush.bf16.msra.mxu0 %v3128
  %4147 = vmatpush.bf16.msra.mxu0 %v3125
  %4148 = vmatpush.bf16.msra.mxu0 %v3122
  %4149 = vmatpush.bf16.msra.mxu0 %v3119
  %4150 = vmatpush.bf16.msra.mxu0 %v3116
  %4151 = vmatmul.bf16.gmra.mxu0 %v950
  %v4152 = vpop.f32.mrf.mxu0
  %v4153 = vadd.f32 %v4134, %v4152
  %v4154 = vpop.f32.mrf.mxu0
  %v4155 = vadd.f32 %v4136, %v4154
  %4156 = vmatmul.bf16.gmra.mxu0 %v973
  %v4157 = vpop.f32.mrf.mxu0
  %v4158 = vadd.f32 %v4139, %v4157
  %v4159 = vpop.f32.mrf.mxu0
  %v4160 = vadd.f32 %v4141, %v4159
  %4161 = vdwg.mxu0
  %4162 = vmatpush.bf16.msra.mxu0 %v3161
  %4163 = vmatpush.bf16.msra.mxu0 %v3158
  %4164 = vmatpush.bf16.msra.mxu0 %v3155
  %4165 = vmatpush.bf16.msra.mxu0 %v3152
  %4166 = vmatpush.bf16.msra.mxu0 %v3149
  %4167 = vmatpush.bf16.msra.mxu0 %v3146
  %4168 = vmatpush.bf16.msra.mxu0 %v3143
  %4169 = vmatpush.bf16.msra.mxu0 %v3140
  %4170 = vmatmul.bf16.gmra.mxu0 %v951
  %v4171 = vpop.f32.mrf.mxu0
  %v4172 = vadd.f32 %v4153, %v4171
  %v4173 = vpop.f32.mrf.mxu0
  %v4174 = vadd.f32 %v4155, %v4173
  %4175 = vmatmul.bf16.gmra.mxu0 %v974
  %v4176 = vpop.f32.mrf.mxu0
  %v4177 = vadd.f32 %v4158, %v4176
  %v4178 = vpop.f32.mrf.mxu0
  %v4179 = vadd.f32 %v4160, %v4178
  %4180 = vdwg.mxu0
  %4181 = vmatpush.bf16.msra.mxu0 %v3185
  %4182 = vmatpush.bf16.msra.mxu0 %v3182
  %4183 = vmatpush.bf16.msra.mxu0 %v3179
  %4184 = vmatpush.bf16.msra.mxu0 %v3176
  %4185 = vmatpush.bf16.msra.mxu0 %v3173
  %4186 = vmatpush.bf16.msra.mxu0 %v3170
  %4187 = vmatpush.bf16.msra.mxu0 %v3167
  %4188 = vmatpush.bf16.msra.mxu0 %v3164
  %4189 = vmatmul.bf16.gmra.mxu0 %v952
  %v4190 = vpop.f32.mrf.mxu0
  %v4191 = vadd.f32 %v4172, %v4190
  %v4192 = vpop.f32.mrf.mxu0
  %v4193 = vadd.f32 %v4174, %v4192
  %4194 = vmatmul.bf16.gmra.mxu0 %v975
  %v4195 = vpop.f32.mrf.mxu0
  %v4196 = vadd.f32 %v4177, %v4195
  %v4197 = vpop.f32.mrf.mxu0
  %v4198 = vadd.f32 %v4179, %v4197
  %4199 = vdwg.mxu0
  %4200 = vmatpush.bf16.msra.mxu0 %v3209
  %4201 = vmatpush.bf16.msra.mxu0 %v3206
  %4202 = vmatpush.bf16.msra.mxu0 %v3203
  %4203 = vmatpush.bf16.msra.mxu0 %v3200
  %4204 = vmatpush.bf16.msra.mxu0 %v3197
  %4205 = vmatpush.bf16.msra.mxu0 %v3194
  %4206 = vmatpush.bf16.msra.mxu0 %v3191
  %4207 = vmatpush.bf16.msra.mxu0 %v3188
  %4208 = vmatmul.bf16.gmra.mxu0 %v953
  %v4209 = vpop.f32.mrf.mxu0
  %v4210 = vadd.f32 %v4191, %v4209
  %v4211 = vpop.f32.mrf.mxu0
  %v4212 = vadd.f32 %v4193, %v4211
  %4213 = vmatmul.bf16.gmra.mxu0 %v976
  %v4214 = vpop.f32.mrf.mxu0
  %v4215 = vadd.f32 %v4196, %v4214
  %v4216 = vpop.f32.mrf.mxu0
  %v4217 = vadd.f32 %v4198, %v4216
  %4218 = vdwg.mxu0
  %4219 = vmatpush.bf16.msra.mxu0 %v3233
  %4220 = vmatpush.bf16.msra.mxu0 %v3230
  %4221 = vmatpush.bf16.msra.mxu0 %v3227
  %4222 = vmatpush.bf16.msra.mxu0 %v3224
  %4223 = vmatpush.bf16.msra.mxu0 %v3221
  %4224 = vmatpush.bf16.msra.mxu0 %v3218
  %4225 = vmatpush.bf16.msra.mxu0 %v3215
  %4226 = vmatpush.bf16.msra.mxu0 %v3212
  %4227 = vmatmul.bf16.gmra.mxu0 %v954
  %v4228 = vpop.f32.mrf.mxu0
  %v4229 = vadd.f32 %v4210, %v4228
  %v4230 = vpop.f32.mrf.mxu0
  %v4231 = vadd.f32 %v4212, %v4230
  %4232 = vmatmul.bf16.gmra.mxu0 %v977
  %v4233 = vpop.f32.mrf.mxu0
  %v4234 = vadd.f32 %v4215, %v4233
  %v4235 = vpop.f32.mrf.mxu0
  %v4236 = vadd.f32 %v4217, %v4235
  %4237 = vdwg.mxu0
  %4238 = vmatpush.bf16.msra.mxu0 %v3257
  %4239 = vmatpush.bf16.msra.mxu0 %v3254
  %4240 = vmatpush.bf16.msra.mxu0 %v3251
  %4241 = vmatpush.bf16.msra.mxu0 %v3248
  %4242 = vmatpush.bf16.msra.mxu0 %v3245
  %4243 = vmatpush.bf16.msra.mxu0 %v3242
  %4244 = vmatpush.bf16.msra.mxu0 %v3239
  %4245 = vmatpush.bf16.msra.mxu0 %v3236
  %4246 = vmatmul.bf16.gmra.mxu0 %v955
  %v4247 = vpop.f32.mrf.mxu0
  %v4248 = vadd.f32 %v4229, %v4247
  %v4249 = vpop.f32.mrf.mxu0
  %v4250 = vadd.f32 %v4231, %v4249
  %4251 = vmatmul.bf16.gmra.mxu0 %v978
  %v4252 = vpop.f32.mrf.mxu0
  %v4253 = vadd.f32 %v4234, %v4252
  %v4254 = vpop.f32.mrf.mxu0
  %v4255 = vadd.f32 %v4236, %v4254
  %4256 = vdwg.mxu0
  %4257 = vmatpush.bf16.msra.mxu0 %v3281
  %4258 = vmatpush.bf16.msra.mxu0 %v3278
  %4259 = vmatpush.bf16.msra.mxu0 %v3275
  %4260 = vmatpush.bf16.msra.mxu0 %v3272
  %4261 = vmatpush.bf16.msra.mxu0 %v3269
  %4262 = vmatpush.bf16.msra.mxu0 %v3266
  %4263 = vmatpush.bf16.msra.mxu0 %v3263
  %4264 = vmatpush.bf16.msra.mxu0 %v3260
  %4265 = vmatmul.bf16.gmra.mxu0 %v956
  %v4266 = vpop.f32.mrf.mxu0
  %v4267 = vadd.f32 %v4248, %v4266
  %v4268 = vpop.f32.mrf.mxu0
  %v4269 = vadd.f32 %v4250, %v4268
  %4270 = vmatmul.bf16.gmra.mxu0 %v979
  %v4271 = vpop.f32.mrf.mxu0
  %v4272 = vadd.f32 %v4253, %v4271
  %v4273 = vpop.f32.mrf.mxu0
  %v4274 = vadd.f32 %v4255, %v4273
  %4275 = vdwg.mxu0
  %4276 = vmatpush.bf16.msra.mxu0 %v3305
  %4277 = vmatpush.bf16.msra.mxu0 %v3302
  %4278 = vmatpush.bf16.msra.mxu0 %v3299
  %4279 = vmatpush.bf16.msra.mxu0 %v3296
  %4280 = vmatpush.bf16.msra.mxu0 %v3293
  %4281 = vmatpush.bf16.msra.mxu0 %v3290
  %4282 = vmatpush.bf16.msra.mxu0 %v3287
  %4283 = vmatpush.bf16.msra.mxu0 %v3284
  %4284 = vmatmul.bf16.gmra.mxu0 %v957
  %v4285 = vpop.f32.mrf.mxu0
  %v4286 = vadd.f32 %v4267, %v4285
  %v4287 = vpop.f32.mrf.mxu0
  %v4288 = vadd.f32 %v4269, %v4287
  %4289 = vmatmul.bf16.gmra.mxu0 %v980
  %v4290 = vpop.f32.mrf.mxu0
  %v4291 = vadd.f32 %v4272, %v4290
  %v4292 = vpop.f32.mrf.mxu0
  %v4293 = vadd.f32 %v4274, %v4292
  %4294 = vdwg.mxu0
  %4295 = vmatpush.bf16.msra.mxu0 %v3329
  %4296 = vmatpush.bf16.msra.mxu0 %v3326
  %4297 = vmatpush.bf16.msra.mxu0 %v3323
  %4298 = vmatpush.bf16.msra.mxu0 %v3320
  %4299 = vmatpush.bf16.msra.mxu0 %v3317
  %4300 = vmatpush.bf16.msra.mxu0 %v3314
  %4301 = vmatpush.bf16.msra.mxu0 %v3311
  %4302 = vmatpush.bf16.msra.mxu0 %v3308
  %4303 = vmatmul.bf16.gmra.mxu0 %v958
  %v4304 = vpop.f32.mrf.mxu0
  %v4305 = vadd.f32 %v4286, %v4304
  %v4306 = vpop.f32.mrf.mxu0
  %v4307 = vadd.f32 %v4288, %v4306
  %4308 = vmatmul.bf16.gmra.mxu0 %v981
  %v4309 = vpop.f32.mrf.mxu0
  %v4310 = vadd.f32 %v4291, %v4309
  %v4311 = vpop.f32.mrf.mxu0
  %v4312 = vadd.f32 %v4293, %v4311
  %4313 = vdwg.mxu0
  %4314 = vmatpush.bf16.msra.mxu0 %v3353
  %4315 = vmatpush.bf16.msra.mxu0 %v3350
  %4316 = vmatpush.bf16.msra.mxu0 %v3347
  %4317 = vmatpush.bf16.msra.mxu0 %v3344
  %4318 = vmatpush.bf16.msra.mxu0 %v3341
  %4319 = vmatpush.bf16.msra.mxu0 %v3338
  %4320 = vmatpush.bf16.msra.mxu0 %v3335
  %4321 = vmatpush.bf16.msra.mxu0 %v3332
  %4322 = vmatmul.bf16.gmra.mxu0 %v959
  %v4323 = vpop.f32.mrf.mxu0
  %v4324 = vadd.f32 %v4305, %v4323
  %v4325 = vpop.f32.mrf.mxu0
  %v4326 = vadd.f32 %v4307, %v4325
  %4327 = vmatmul.bf16.gmra.mxu0 %v982
  %v4328 = vpop.f32.mrf.mxu0
  %v4329 = vadd.f32 %v4310, %v4328
  %v4330 = vpop.f32.mrf.mxu0
  %v4331 = vadd.f32 %v4312, %v4330
  %4332 = vdwg.mxu0
  %4333 = vmatpush.bf16.msra.mxu0 0
  %4334 = vmatpush.bf16.msra.mxu0 0
  %4335 = vmatpush.bf16.msra.mxu0 0
  %4336 = vmatpush.bf16.msra.mxu0 0
  %4337 = vmatpush.bf16.msra.mxu0 %v3365
  %4338 = vmatpush.bf16.msra.mxu0 %v3362
  %4339 = vmatpush.bf16.msra.mxu0 %v3359
  %4340 = vmatpush.bf16.msra.mxu0 %v3356
  %4341 = vmatmul.bf16.gmra.mxu0 %v3910
  %v4342 = vpop.f32.mrf.mxu0
  %v4343 = vadd.f32 %v4324, %v4342
  %v4344 = vpop.f32.mrf.mxu0
  %v4345 = vadd.f32 %v4326, %v4344
  %4346 = vmatmul.bf16.gmra.mxu0 %v3913
  %v4347 = vpop.f32.mrf.mxu0
  %v4348 = vadd.f32 %v4329, %v4347
  %v4349 = vpop.f32.mrf.mxu0
  %v4350 = vadd.f32 %v4331, %v4349
  %4351 = vdwg.mxu0
  %4352 = vmatpush.bf16.msra.mxu0 %v2850
  %4353 = vmatpush.bf16.msra.mxu0 %v2847
  %4354 = vmatpush.bf16.msra.mxu0 %v2844
  %4355 = vmatpush.bf16.msra.mxu0 %v2841
  %4356 = vmatpush.bf16.msra.mxu0 %v2838
  %4357 = vmatpush.bf16.msra.mxu0 %v2835
  %4358 = vmatpush.bf16.msra.mxu0 %v2832
  %4359 = vmatpush.bf16.msra.mxu0 %v2829
  %4360 = vmatmul.bf16.gmra.mxu0 %v938
  %v4361 = vpop.f32.mrf.mxu0
  %v4362 = vadd.f32 0.0, %v4361
  %v4363 = vpop.f32.mrf.mxu0
  %v4364 = vadd.f32 0.0, %v4363
  %4365 = vmatmul.bf16.gmra.mxu0 %v961
  %v4366 = vpop.f32.mrf.mxu0
  %v4367 = vadd.f32 0.0, %v4366
  %v4368 = vpop.f32.mrf.mxu0
  %v4369 = vadd.f32 0.0, %v4368
  %4370 = vdwg.mxu0
  %4371 = vmatpush.bf16.msra.mxu0 %v2874
  %4372 = vmatpush.bf16.msra.mxu0 %v2871
  %4373 = vmatpush.bf16.msra.mxu0 %v2868
  %4374 = vmatpush.bf16.msra.mxu0 %v2865
  %4375 = vmatpush.bf16.msra.mxu0 %v2862
  %4376 = vmatpush.bf16.msra.mxu0 %v2859
  %4377 = vmatpush.bf16.msra.mxu0 %v2856
  %4378 = vmatpush.bf16.msra.mxu0 %v2853
  %4379 = vmatmul.bf16.gmra.mxu0 %v939
  %v4380 = vpop.f32.mrf.mxu0
  %v4381 = vadd.f32 %v4362, %v4380
  %v4382 = vpop.f32.mrf.mxu0
  %v4383 = vadd.f32 %v4364, %v4382
  %4384 = vmatmul.bf16.gmra.mxu0 %v962
  %v4385 = vpop.f32.mrf.mxu0
  %v4386 = vadd.f32 %v4367, %v4385
  %v4387 = vpop.f32.mrf.mxu0
  %v4388 = vadd.f32 %v4369, %v4387
  %4389 = vdwg.mxu0
  %4390 = vmatpush.bf16.msra.mxu0 %v2898
  %4391 = vmatpush.bf16.msra.mxu0 %v2895
  %4392 = vmatpush.bf16.msra.mxu0 %v2892
  %4393 = vmatpush.bf16.msra.mxu0 %v2889
  %4394 = vmatpush.bf16.msra.mxu0 %v2886
  %4395 = vmatpush.bf16.msra.mxu0 %v2883
  %4396 = vmatpush.bf16.msra.mxu0 %v2880
  %4397 = vmatpush.bf16.msra.mxu0 %v2877
  %4398 = vmatmul.bf16.gmra.mxu0 %v940
  %v4399 = vpop.f32.mrf.mxu0
  %v4400 = vadd.f32 %v4381, %v4399
  %v4401 = vpop.f32.mrf.mxu0
  %v4402 = vadd.f32 %v4383, %v4401
  %4403 = vmatmul.bf16.gmra.mxu0 %v963
  %v4404 = vpop.f32.mrf.mxu0
  %v4405 = vadd.f32 %v4386, %v4404
  %v4406 = vpop.f32.mrf.mxu0
  %v4407 = vadd.f32 %v4388, %v4406
  %4408 = vdwg.mxu0
  %4409 = vmatpush.bf16.msra.mxu0 %v2922
  %4410 = vmatpush.bf16.msra.mxu0 %v2919
  %4411 = vmatpush.bf16.msra.mxu0 %v2916
  %4412 = vmatpush.bf16.msra.mxu0 %v2913
  %4413 = vmatpush.bf16.msra.mxu0 %v2910
  %4414 = vmatpush.bf16.msra.mxu0 %v2907
  %4415 = vmatpush.bf16.msra.mxu0 %v2904
  %4416 = vmatpush.bf16.msra.mxu0 %v2901
  %4417 = vmatmul.bf16.gmra.mxu0 %v941
  %v4418 = vpop.f32.mrf.mxu0
  %v4419 = vadd.f32 %v4400, %v4418
  %v4420 = vpop.f32.mrf.mxu0
  %v4421 = vadd.f32 %v4402, %v4420
  %4422 = vmatmul.bf16.gmra.mxu0 %v964
  %v4423 = vpop.f32.mrf.mxu0
  %v4424 = vadd.f32 %v4405, %v4423
  %v4425 = vpop.f32.mrf.mxu0
  %v4426 = vadd.f32 %v4407, %v4425
  %4427 = vdwg.mxu0
  %4428 = vmatpush.bf16.msra.mxu0 %v2946
  %4429 = vmatpush.bf16.msra.mxu0 %v2943
  %4430 = vmatpush.bf16.msra.mxu0 %v2940
  %4431 = vmatpush.bf16.msra.mxu0 %v2937
  %4432 = vmatpush.bf16.msra.mxu0 %v2934
  %4433 = vmatpush.bf16.msra.mxu0 %v2931
  %4434 = vmatpush.bf16.msra.mxu0 %v2928
  %4435 = vmatpush.bf16.msra.mxu0 %v2925
  %4436 = vmatmul.bf16.gmra.mxu0 %v942
  %v4437 = vpop.f32.mrf.mxu0
  %v4438 = vadd.f32 %v4419, %v4437
  %v4439 = vpop.f32.mrf.mxu0
  %v4440 = vadd.f32 %v4421, %v4439
  %4441 = vmatmul.bf16.gmra.mxu0 %v965
  %v4442 = vpop.f32.mrf.mxu0
  %v4443 = vadd.f32 %v4424, %v4442
  %v4444 = vpop.f32.mrf.mxu0
  %v4445 = vadd.f32 %v4426, %v4444
  %4446 = vdwg.mxu0
  %4447 = vmatpush.bf16.msra.mxu0 %v2970
  %4448 = vmatpush.bf16.msra.mxu0 %v2967
  %4449 = vmatpush.bf16.msra.mxu0 %v2964
  %4450 = vmatpush.bf16.msra.mxu0 %v2961
  %4451 = vmatpush.bf16.msra.mxu0 %v2958
  %4452 = vmatpush.bf16.msra.mxu0 %v2955
  %4453 = vmatpush.bf16.msra.mxu0 %v2952
  %4454 = vmatpush.bf16.msra.mxu0 %v2949
  %4455 = vmatmul.bf16.gmra.mxu0 %v943
  %v4456 = vpop.f32.mrf.mxu0
  %v4457 = vadd.f32 %v4438, %v4456
  %v4458 = vpop.f32.mrf.mxu0
  %v4459 = vadd.f32 %v4440, %v4458
  %4460 = vmatmul.bf16.gmra.mxu0 %v966
  %v4461 = vpop.f32.mrf.mxu0
  %v4462 = vadd.f32 %v4443, %v4461
  %v4463 = vpop.f32.mrf.mxu0
  %v4464 = vadd.f32 %v4445, %v4463
  %4465 = vdwg.mxu0
  %4466 = vmatpush.bf16.msra.mxu0 %v2994
  %4467 = vmatpush.bf16.msra.mxu0 %v2991
  %4468 = vmatpush.bf16.msra.mxu0 %v2988
  %4469 = vmatpush.bf16.msra.mxu0 %v2985
  %4470 = vmatpush.bf16.msra.mxu0 %v2982
  %4471 = vmatpush.bf16.msra.mxu0 %v2979
  %4472 = vmatpush.bf16.msra.mxu0 %v2976
  %4473 = vmatpush.bf16.msra.mxu0 %v2973
  %4474 = vmatmul.bf16.gmra.mxu0 %v944
  %v4475 = vpop.f32.mrf.mxu0
  %v4476 = vadd.f32 %v4457, %v4475
  %v4477 = vpop.f32.mrf.mxu0
  %v4478 = vadd.f32 %v4459, %v4477
  %4479 = vmatmul.bf16.gmra.mxu0 %v967
  %v4480 = vpop.f32.mrf.mxu0
  %v4481 = vadd.f32 %v4462, %v4480
  %v4482 = vpop.f32.mrf.mxu0
  %v4483 = vadd.f32 %v4464, %v4482
  %4484 = vdwg.mxu0
  %4485 = vmatpush.bf16.msra.mxu0 %v3018
  %4486 = vmatpush.bf16.msra.mxu0 %v3015
  %4487 = vmatpush.bf16.msra.mxu0 %v3012
  %4488 = vmatpush.bf16.msra.mxu0 %v3009
  %4489 = vmatpush.bf16.msra.mxu0 %v3006
  %4490 = vmatpush.bf16.msra.mxu0 %v3003
  %4491 = vmatpush.bf16.msra.mxu0 %v3000
  %4492 = vmatpush.bf16.msra.mxu0 %v2997
  %4493 = vmatmul.bf16.gmra.mxu0 %v945
  %v4494 = vpop.f32.mrf.mxu0
  %v4495 = vadd.f32 %v4476, %v4494
  %v4496 = vpop.f32.mrf.mxu0
  %v4497 = vadd.f32 %v4478, %v4496
  %4498 = vmatmul.bf16.gmra.mxu0 %v968
  %v4499 = vpop.f32.mrf.mxu0
  %v4500 = vadd.f32 %v4481, %v4499
  %v4501 = vpop.f32.mrf.mxu0
  %v4502 = vadd.f32 %v4483, %v4501
  %4503 = vdwg.mxu0
  %4504 = vmatpush.bf16.msra.mxu0 %v3042
  %4505 = vmatpush.bf16.msra.mxu0 %v3039
  %4506 = vmatpush.bf16.msra.mxu0 %v3036
  %4507 = vmatpush.bf16.msra.mxu0 %v3033
  %4508 = vmatpush.bf16.msra.mxu0 %v3030
  %4509 = vmatpush.bf16.msra.mxu0 %v3027
  %4510 = vmatpush.bf16.msra.mxu0 %v3024
  %4511 = vmatpush.bf16.msra.mxu0 %v3021
  %4512 = vmatmul.bf16.gmra.mxu0 %v946
  %v4513 = vpop.f32.mrf.mxu0
  %v4514 = vadd.f32 %v4495, %v4513
  %v4515 = vpop.f32.mrf.mxu0
  %v4516 = vadd.f32 %v4497, %v4515
  %4517 = vmatmul.bf16.gmra.mxu0 %v969
  %v4518 = vpop.f32.mrf.mxu0
  %v4519 = vadd.f32 %v4500, %v4518
  %v4520 = vpop.f32.mrf.mxu0
  %v4521 = vadd.f32 %v4502, %v4520
  %4522 = vdwg.mxu0
  %4523 = vmatpush.bf16.msra.mxu0 %v3066
  %4524 = vmatpush.bf16.msra.mxu0 %v3063
  %4525 = vmatpush.bf16.msra.mxu0 %v3060
  %4526 = vmatpush.bf16.msra.mxu0 %v3057
  %4527 = vmatpush.bf16.msra.mxu0 %v3054
  %4528 = vmatpush.bf16.msra.mxu0 %v3051
  %4529 = vmatpush.bf16.msra.mxu0 %v3048
  %4530 = vmatpush.bf16.msra.mxu0 %v3045
  %4531 = vmatmul.bf16.gmra.mxu0 %v947
  %v4532 = vpop.f32.mrf.mxu0
  %v4533 = vadd.f32 %v4514, %v4532
  %v4534 = vpop.f32.mrf.mxu0
  %v4535 = vadd.f32 %v4516, %v4534
  %4536 = vmatmul.bf16.gmra.mxu0 %v970
  %v4537 = vpop.f32.mrf.mxu0
  %v4538 = vadd.f32 %v4519, %v4537
  %v4539 = vpop.f32.mrf.mxu0
  %v4540 = vadd.f32 %v4521, %v4539
  %4541 = vdwg.mxu0
  %4542 = vmatpush.bf16.msra.mxu0 %v3090
  %4543 = vmatpush.bf16.msra.mxu0 %v3087
  %4544 = vmatpush.bf16.msra.mxu0 %v3084
  %4545 = vmatpush.bf16.msra.mxu0 %v3081
  %4546 = vmatpush.bf16.msra.mxu0 %v3078
  %4547 = vmatpush.bf16.msra.mxu0 %v3075
  %4548 = vmatpush.bf16.msra.mxu0 %v3072
  %4549 = vmatpush.bf16.msra.mxu0 %v3069
  %4550 = vmatmul.bf16.gmra.mxu0 %v948
  %v4551 = vpop.f32.mrf.mxu0
  %v4552 = vadd.f32 %v4533, %v4551
  %v4553 = vpop.f32.mrf.mxu0
  %v4554 = vadd.f32 %v4535, %v4553
  %4555 = vmatmul.bf16.gmra.mxu0 %v971
  %v4556 = vpop.f32.mrf.mxu0
  %v4557 = vadd.f32 %v4538, %v4556
  %v4558 = vpop.f32.mrf.mxu0
  %v4559 = vadd.f32 %v4540, %v4558
  %4560 = vdwg.mxu0
  %4561 = vmatpush.bf16.msra.mxu0 %v3114
  %4562 = vmatpush.bf16.msra.mxu0 %v3111
  %4563 = vmatpush.bf16.msra.mxu0 %v3108
  %4564 = vmatpush.bf16.msra.mxu0 %v3105
  %4565 = vmatpush.bf16.msra.mxu0 %v3102
  %4566 = vmatpush.bf16.msra.mxu0 %v3099
  %4567 = vmatpush.bf16.msra.mxu0 %v3096
  %4568 = vmatpush.bf16.msra.mxu0 %v3093
  %4569 = vmatmul.bf16.gmra.mxu0 %v949
  %v4570 = vpop.f32.mrf.mxu0
  %v4571 = vadd.f32 %v4552, %v4570
  %v4572 = vpop.f32.mrf.mxu0
  %v4573 = vadd.f32 %v4554, %v4572
  %4574 = vmatmul.bf16.gmra.mxu0 %v972
  %v4575 = vpop.f32.mrf.mxu0
  %v4576 = vadd.f32 %v4557, %v4575
  %v4577 = vpop.f32.mrf.mxu0
  %v4578 = vadd.f32 %v4559, %v4577
  %4579 = vdwg.mxu0
  %4580 = vmatpush.bf16.msra.mxu0 %v3138
  %4581 = vmatpush.bf16.msra.mxu0 %v3135
  %4582 = vmatpush.bf16.msra.mxu0 %v3132
  %4583 = vmatpush.bf16.msra.mxu0 %v3129
  %4584 = vmatpush.bf16.msra.mxu0 %v3126
  %4585 = vmatpush.bf16.msra.mxu0 %v3123
  %4586 = vmatpush.bf16.msra.mxu0 %v3120
  %4587 = vmatpush.bf16.msra.mxu0 %v3117
  %4588 = vmatmul.bf16.gmra.mxu0 %v950
  %v4589 = vpop.f32.mrf.mxu0
  %v4590 = vadd.f32 %v4571, %v4589
  %v4591 = vpop.f32.mrf.mxu0
  %v4592 = vadd.f32 %v4573, %v4591
  %4593 = vmatmul.bf16.gmra.mxu0 %v973
  %v4594 = vpop.f32.mrf.mxu0
  %v4595 = vadd.f32 %v4576, %v4594
  %v4596 = vpop.f32.mrf.mxu0
  %v4597 = vadd.f32 %v4578, %v4596
  %4598 = vdwg.mxu0
  %4599 = vmatpush.bf16.msra.mxu0 %v3162
  %4600 = vmatpush.bf16.msra.mxu0 %v3159
  %4601 = vmatpush.bf16.msra.mxu0 %v3156
  %4602 = vmatpush.bf16.msra.mxu0 %v3153
  %4603 = vmatpush.bf16.msra.mxu0 %v3150
  %4604 = vmatpush.bf16.msra.mxu0 %v3147
  %4605 = vmatpush.bf16.msra.mxu0 %v3144
  %4606 = vmatpush.bf16.msra.mxu0 %v3141
  %4607 = vmatmul.bf16.gmra.mxu0 %v951
  %v4608 = vpop.f32.mrf.mxu0
  %v4609 = vadd.f32 %v4590, %v4608
  %v4610 = vpop.f32.mrf.mxu0
  %v4611 = vadd.f32 %v4592, %v4610
  %4612 = vmatmul.bf16.gmra.mxu0 %v974
  %v4613 = vpop.f32.mrf.mxu0
  %v4614 = vadd.f32 %v4595, %v4613
  %v4615 = vpop.f32.mrf.mxu0
  %v4616 = vadd.f32 %v4597, %v4615
  %4617 = vdwg.mxu0
  %4618 = vmatpush.bf16.msra.mxu0 %v3186
  %4619 = vmatpush.bf16.msra.mxu0 %v3183
  %4620 = vmatpush.bf16.msra.mxu0 %v3180
  %4621 = vmatpush.bf16.msra.mxu0 %v3177
  %4622 = vmatpush.bf16.msra.mxu0 %v3174
  %4623 = vmatpush.bf16.msra.mxu0 %v3171
  %4624 = vmatpush.bf16.msra.mxu0 %v3168
  %4625 = vmatpush.bf16.msra.mxu0 %v3165
  %4626 = vmatmul.bf16.gmra.mxu0 %v952
  %v4627 = vpop.f32.mrf.mxu0
  %v4628 = vadd.f32 %v4609, %v4627
  %v4629 = vpop.f32.mrf.mxu0
  %v4630 = vadd.f32 %v4611, %v4629
  %4631 = vmatmul.bf16.gmra.mxu0 %v975
  %v4632 = vpop.f32.mrf.mxu0
  %v4633 = vadd.f32 %v4614, %v4632
  %v4634 = vpop.f32.mrf.mxu0
  %v4635 = vadd.f32 %v4616, %v4634
  %4636 = vdwg.mxu0
  %4637 = vmatpush.bf16.msra.mxu0 %v3210
  %4638 = vmatpush.bf16.msra.mxu0 %v3207
  %4639 = vmatpush.bf16.msra.mxu0 %v3204
  %4640 = vmatpush.bf16.msra.mxu0 %v3201
  %4641 = vmatpush.bf16.msra.mxu0 %v3198
  %4642 = vmatpush.bf16.msra.mxu0 %v3195
  %4643 = vmatpush.bf16.msra.mxu0 %v3192
  %4644 = vmatpush.bf16.msra.mxu0 %v3189
  %4645 = vmatmul.bf16.gmra.mxu0 %v953
  %v4646 = vpop.f32.mrf.mxu0
  %v4647 = vadd.f32 %v4628, %v4646
  %v4648 = vpop.f32.mrf.mxu0
  %v4649 = vadd.f32 %v4630, %v4648
  %4650 = vmatmul.bf16.gmra.mxu0 %v976
  %v4651 = vpop.f32.mrf.mxu0
  %v4652 = vadd.f32 %v4633, %v4651
  %v4653 = vpop.f32.mrf.mxu0
  %v4654 = vadd.f32 %v4635, %v4653
  %4655 = vdwg.mxu0
  %4656 = vmatpush.bf16.msra.mxu0 %v3234
  %4657 = vmatpush.bf16.msra.mxu0 %v3231
  %4658 = vmatpush.bf16.msra.mxu0 %v3228
  %4659 = vmatpush.bf16.msra.mxu0 %v3225
  %4660 = vmatpush.bf16.msra.mxu0 %v3222
  %4661 = vmatpush.bf16.msra.mxu0 %v3219
  %4662 = vmatpush.bf16.msra.mxu0 %v3216
  %4663 = vmatpush.bf16.msra.mxu0 %v3213
  %4664 = vmatmul.bf16.gmra.mxu0 %v954
  %v4665 = vpop.f32.mrf.mxu0
  %v4666 = vadd.f32 %v4647, %v4665
  %v4667 = vpop.f32.mrf.mxu0
  %v4668 = vadd.f32 %v4649, %v4667
  %4669 = vmatmul.bf16.gmra.mxu0 %v977
  %v4670 = vpop.f32.mrf.mxu0
  %v4671 = vadd.f32 %v4652, %v4670
  %v4672 = vpop.f32.mrf.mxu0
  %v4673 = vadd.f32 %v4654, %v4672
  %4674 = vdwg.mxu0
  %4675 = vmatpush.bf16.msra.mxu0 %v3258
  %4676 = vmatpush.bf16.msra.mxu0 %v3255
  %4677 = vmatpush.bf16.msra.mxu0 %v3252
  %4678 = vmatpush.bf16.msra.mxu0 %v3249
  %4679 = vmatpush.bf16.msra.mxu0 %v3246
  %4680 = vmatpush.bf16.msra.mxu0 %v3243
  %4681 = vmatpush.bf16.msra.mxu0 %v3240
  %4682 = vmatpush.bf16.msra.mxu0 %v3237
  %4683 = vmatmul.bf16.gmra.mxu0 %v955
  %v4684 = vpop.f32.mrf.mxu0
  %v4685 = vadd.f32 %v4666, %v4684
  %v4686 = vpop.f32.mrf.mxu0
  %v4687 = vadd.f32 %v4668, %v4686
  %4688 = vmatmul.bf16.gmra.mxu0 %v978
  %v4689 = vpop.f32.mrf.mxu0
  %v4690 = vadd.f32 %v4671, %v4689
  %v4691 = vpop.f32.mrf.mxu0
  %v4692 = vadd.f32 %v4673, %v4691
  %4693 = vdwg.mxu0
  %4694 = vmatpush.bf16.msra.mxu0 %v3282
  %4695 = vmatpush.bf16.msra.mxu0 %v3279
  %4696 = vmatpush.bf16.msra.mxu0 %v3276
  %4697 = vmatpush.bf16.msra.mxu0 %v3273
  %4698 = vmatpush.bf16.msra.mxu0 %v3270
  %4699 = vmatpush.bf16.msra.mxu0 %v3267
  %4700 = vmatpush.bf16.msra.mxu0 %v3264
  %4701 = vmatpush.bf16.msra.mxu0 %v3261
  %4702 = vmatmul.bf16.gmra.mxu0 %v956
  %v4703 = vpop.f32.mrf.mxu0
  %v4704 = vadd.f32 %v4685, %v4703
  %v4705 = vpop.f32.mrf.mxu0
  %v4706 = vadd.f32 %v4687, %v4705
  %4707 = vmatmul.bf16.gmra.mxu0 %v979
  %v4708 = vpop.f32.mrf.mxu0
  %v4709 = vadd.f32 %v4690, %v4708
  %v4710 = vpop.f32.mrf.mxu0
  %v4711 = vadd.f32 %v4692, %v4710
  %4712 = vdwg.mxu0
  %4713 = vmatpush.bf16.msra.mxu0 %v3306
  %4714 = vmatpush.bf16.msra.mxu0 %v3303
  %4715 = vmatpush.bf16.msra.mxu0 %v3300
  %4716 = vmatpush.bf16.msra.mxu0 %v3297
  %4717 = vmatpush.bf16.msra.mxu0 %v3294
  %4718 = vmatpush.bf16.msra.mxu0 %v3291
  %4719 = vmatpush.bf16.msra.mxu0 %v3288
  %4720 = vmatpush.bf16.msra.mxu0 %v3285
  %4721 = vmatmul.bf16.gmra.mxu0 %v957
  %v4722 = vpop.f32.mrf.mxu0
  %v4723 = vadd.f32 %v4704, %v4722
  %v4724 = vpop.f32.mrf.mxu0
  %v4725 = vadd.f32 %v4706, %v4724
  %4726 = vmatmul.bf16.gmra.mxu0 %v980
  %v4727 = vpop.f32.mrf.mxu0
  %v4728 = vadd.f32 %v4709, %v4727
  %v4729 = vpop.f32.mrf.mxu0
  %v4730 = vadd.f32 %v4711, %v4729
  %4731 = vdwg.mxu0
  %4732 = vmatpush.bf16.msra.mxu0 %v3330
  %4733 = vmatpush.bf16.msra.mxu0 %v3327
  %4734 = vmatpush.bf16.msra.mxu0 %v3324
  %4735 = vmatpush.bf16.msra.mxu0 %v3321
  %4736 = vmatpush.bf16.msra.mxu0 %v3318
  %4737 = vmatpush.bf16.msra.mxu0 %v3315
  %4738 = vmatpush.bf16.msra.mxu0 %v3312
  %4739 = vmatpush.bf16.msra.mxu0 %v3309
  %4740 = vmatmul.bf16.gmra.mxu0 %v958
  %v4741 = vpop.f32.mrf.mxu0
  %v4742 = vadd.f32 %v4723, %v4741
  %v4743 = vpop.f32.mrf.mxu0
  %v4744 = vadd.f32 %v4725, %v4743
  %4745 = vmatmul.bf16.gmra.mxu0 %v981
  %v4746 = vpop.f32.mrf.mxu0
  %v4747 = vadd.f32 %v4728, %v4746
  %v4748 = vpop.f32.mrf.mxu0
  %v4749 = vadd.f32 %v4730, %v4748
  %4750 = vdwg.mxu0
  %4751 = vmatpush.bf16.msra.mxu0 %v3354
  %4752 = vmatpush.bf16.msra.mxu0 %v3351
  %4753 = vmatpush.bf16.msra.mxu0 %v3348
  %4754 = vmatpush.bf16.msra.mxu0 %v3345
  %4755 = vmatpush.bf16.msra.mxu0 %v3342
  %4756 = vmatpush.bf16.msra.mxu0 %v3339
  %4757 = vmatpush.bf16.msra.mxu0 %v3336
  %4758 = vmatpush.bf16.msra.mxu0 %v3333
  %4759 = vmatmul.bf16.gmra.mxu0 %v959
  %v4760 = vpop.f32.mrf.mxu0
  %v4761 = vadd.f32 %v4742, %v4760
  %v4762 = vpop.f32.mrf.mxu0
  %v4763 = vadd.f32 %v4744, %v4762
  %4764 = vmatmul.bf16.gmra.mxu0 %v982
  %v4765 = vpop.f32.mrf.mxu0
  %v4766 = vadd.f32 %v4747, %v4765
  %v4767 = vpop.f32.mrf.mxu0
  %v4768 = vadd.f32 %v4749, %v4767
  %4769 = vdwg.mxu0
  %4770 = vmatpush.bf16.msra.mxu0 0
  %4771 = vmatpush.bf16.msra.mxu0 0
  %4772 = vmatpush.bf16.msra.mxu0 0
  %4773 = vmatpush.bf16.msra.mxu0 0
  %4774 = vmatpush.bf16.msra.mxu0 %v3366
  %4775 = vmatpush.bf16.msra.mxu0 %v3363
  %4776 = vmatpush.bf16.msra.mxu0 %v3360
  %4777 = vmatpush.bf16.msra.mxu0 %v3357
  %4778 = vmatmul.bf16.gmra.mxu0 %v3910
  %v4779 = vpop.f32.mrf.mxu0
  %v4780 = vadd.f32 %v4761, %v4779
  %v4781 = vpop.f32.mrf.mxu0
  %v4782 = vadd.f32 %v4763, %v4781
  %4783 = vmatmul.bf16.gmra.mxu0 %v3913
  %v4784 = vpop.f32.mrf.mxu0
  %v4785 = vadd.f32 %v4766, %v4784
  %v4786 = vpop.f32.mrf.mxu0
  %v4787 = vadd.f32 %v4768, %v4786
  %4788 = vdwg.mxu0
  %4789 = vmatpush.bf16.msra.mxu0 %v2851
  %4790 = vmatpush.bf16.msra.mxu0 %v2848
  %4791 = vmatpush.bf16.msra.mxu0 %v2845
  %4792 = vmatpush.bf16.msra.mxu0 %v2842
  %4793 = vmatpush.bf16.msra.mxu0 %v2839
  %4794 = vmatpush.bf16.msra.mxu0 %v2836
  %4795 = vmatpush.bf16.msra.mxu0 %v2833
  %4796 = vmatpush.bf16.msra.mxu0 %v2830
  %4797 = vmatmul.bf16.gmra.mxu0 %v938
  %v4798 = vpop.f32.mrf.mxu0
  %v4799 = vadd.f32 0.0, %v4798
  %v4800 = vpop.f32.mrf.mxu0
  %v4801 = vadd.f32 0.0, %v4800
  %4802 = vmatmul.bf16.gmra.mxu0 %v961
  %v4803 = vpop.f32.mrf.mxu0
  %v4804 = vadd.f32 0.0, %v4803
  %v4805 = vpop.f32.mrf.mxu0
  %v4806 = vadd.f32 0.0, %v4805
  %4807 = vdwg.mxu0
  %4808 = vmatpush.bf16.msra.mxu0 %v2875
  %4809 = vmatpush.bf16.msra.mxu0 %v2872
  %4810 = vmatpush.bf16.msra.mxu0 %v2869
  %4811 = vmatpush.bf16.msra.mxu0 %v2866
  %4812 = vmatpush.bf16.msra.mxu0 %v2863
  %4813 = vmatpush.bf16.msra.mxu0 %v2860
  %4814 = vmatpush.bf16.msra.mxu0 %v2857
  %4815 = vmatpush.bf16.msra.mxu0 %v2854
  %4816 = vmatmul.bf16.gmra.mxu0 %v939
  %v4817 = vpop.f32.mrf.mxu0
  %v4818 = vadd.f32 %v4799, %v4817
  %v4819 = vpop.f32.mrf.mxu0
  %v4820 = vadd.f32 %v4801, %v4819
  %4821 = vmatmul.bf16.gmra.mxu0 %v962
  %v4822 = vpop.f32.mrf.mxu0
  %v4823 = vadd.f32 %v4804, %v4822
  %v4824 = vpop.f32.mrf.mxu0
  %v4825 = vadd.f32 %v4806, %v4824
  %4826 = vdwg.mxu0
  %4827 = vmatpush.bf16.msra.mxu0 %v2899
  %4828 = vmatpush.bf16.msra.mxu0 %v2896
  %4829 = vmatpush.bf16.msra.mxu0 %v2893
  %4830 = vmatpush.bf16.msra.mxu0 %v2890
  %4831 = vmatpush.bf16.msra.mxu0 %v2887
  %4832 = vmatpush.bf16.msra.mxu0 %v2884
  %4833 = vmatpush.bf16.msra.mxu0 %v2881
  %4834 = vmatpush.bf16.msra.mxu0 %v2878
  %4835 = vmatmul.bf16.gmra.mxu0 %v940
  %v4836 = vpop.f32.mrf.mxu0
  %v4837 = vadd.f32 %v4818, %v4836
  %v4838 = vpop.f32.mrf.mxu0
  %v4839 = vadd.f32 %v4820, %v4838
  %4840 = vmatmul.bf16.gmra.mxu0 %v963
  %v4841 = vpop.f32.mrf.mxu0
  %v4842 = vadd.f32 %v4823, %v4841
  %v4843 = vpop.f32.mrf.mxu0
  %v4844 = vadd.f32 %v4825, %v4843
  %4845 = vdwg.mxu0
  %4846 = vmatpush.bf16.msra.mxu0 %v2923
  %4847 = vmatpush.bf16.msra.mxu0 %v2920
  %4848 = vmatpush.bf16.msra.mxu0 %v2917
  %4849 = vmatpush.bf16.msra.mxu0 %v2914
  %4850 = vmatpush.bf16.msra.mxu0 %v2911
  %4851 = vmatpush.bf16.msra.mxu0 %v2908
  %4852 = vmatpush.bf16.msra.mxu0 %v2905
  %4853 = vmatpush.bf16.msra.mxu0 %v2902
  %4854 = vmatmul.bf16.gmra.mxu0 %v941
  %v4855 = vpop.f32.mrf.mxu0
  %v4856 = vadd.f32 %v4837, %v4855
  %v4857 = vpop.f32.mrf.mxu0
  %v4858 = vadd.f32 %v4839, %v4857
  %4859 = vmatmul.bf16.gmra.mxu0 %v964
  %v4860 = vpop.f32.mrf.mxu0
  %v4861 = vadd.f32 %v4842, %v4860
  %v4862 = vpop.f32.mrf.mxu0
  %v4863 = vadd.f32 %v4844, %v4862
  %4864 = vdwg.mxu0
  %4865 = vmatpush.bf16.msra.mxu0 %v2947
  %4866 = vmatpush.bf16.msra.mxu0 %v2944
  %4867 = vmatpush.bf16.msra.mxu0 %v2941
  %4868 = vmatpush.bf16.msra.mxu0 %v2938
  %4869 = vmatpush.bf16.msra.mxu0 %v2935
  %4870 = vmatpush.bf16.msra.mxu0 %v2932
  %4871 = vmatpush.bf16.msra.mxu0 %v2929
  %4872 = vmatpush.bf16.msra.mxu0 %v2926
  %4873 = vmatmul.bf16.gmra.mxu0 %v942
  %v4874 = vpop.f32.mrf.mxu0
  %v4875 = vadd.f32 %v4856, %v4874
  %v4876 = vpop.f32.mrf.mxu0
  %v4877 = vadd.f32 %v4858, %v4876
  %4878 = vmatmul.bf16.gmra.mxu0 %v965
  %v4879 = vpop.f32.mrf.mxu0
  %v4880 = vadd.f32 %v4861, %v4879
  %v4881 = vpop.f32.mrf.mxu0
  %v4882 = vadd.f32 %v4863, %v4881
  %4883 = vdwg.mxu0
  %4884 = vmatpush.bf16.msra.mxu0 %v2971
  %4885 = vmatpush.bf16.msra.mxu0 %v2968
  %4886 = vmatpush.bf16.msra.mxu0 %v2965
  %4887 = vmatpush.bf16.msra.mxu0 %v2962
  %4888 = vmatpush.bf16.msra.mxu0 %v2959
  %4889 = vmatpush.bf16.msra.mxu0 %v2956
  %4890 = vmatpush.bf16.msra.mxu0 %v2953
  %4891 = vmatpush.bf16.msra.mxu0 %v2950
  %4892 = vmatmul.bf16.gmra.mxu0 %v943
  %v4893 = vpop.f32.mrf.mxu0
  %v4894 = vadd.f32 %v4875, %v4893
  %v4895 = vpop.f32.mrf.mxu0
  %v4896 = vadd.f32 %v4877, %v4895
  %4897 = vmatmul.bf16.gmra.mxu0 %v966
  %v4898 = vpop.f32.mrf.mxu0
  %v4899 = vadd.f32 %v4880, %v4898
  %v4900 = vpop.f32.mrf.mxu0
  %v4901 = vadd.f32 %v4882, %v4900
  %4902 = vdwg.mxu0
  %4903 = vmatpush.bf16.msra.mxu0 %v2995
  %4904 = vmatpush.bf16.msra.mxu0 %v2992
  %4905 = vmatpush.bf16.msra.mxu0 %v2989
  %4906 = vmatpush.bf16.msra.mxu0 %v2986
  %4907 = vmatpush.bf16.msra.mxu0 %v2983
  %4908 = vmatpush.bf16.msra.mxu0 %v2980
  %4909 = vmatpush.bf16.msra.mxu0 %v2977
  %4910 = vmatpush.bf16.msra.mxu0 %v2974
  %4911 = vmatmul.bf16.gmra.mxu0 %v944
  %v4912 = vpop.f32.mrf.mxu0
  %v4913 = vadd.f32 %v4894, %v4912
  %v4914 = vpop.f32.mrf.mxu0
  %v4915 = vadd.f32 %v4896, %v4914
  %4916 = vmatmul.bf16.gmra.mxu0 %v967
  %v4917 = vpop.f32.mrf.mxu0
  %v4918 = vadd.f32 %v4899, %v4917
  %v4919 = vpop.f32.mrf.mxu0
  %v4920 = vadd.f32 %v4901, %v4919
  %4921 = vdwg.mxu0
  %4922 = vmatpush.bf16.msra.mxu0 %v3019
  %4923 = vmatpush.bf16.msra.mxu0 %v3016
  %4924 = vmatpush.bf16.msra.mxu0 %v3013
  %4925 = vmatpush.bf16.msra.mxu0 %v3010
  %4926 = vmatpush.bf16.msra.mxu0 %v3007
  %4927 = vmatpush.bf16.msra.mxu0 %v3004
  %4928 = vmatpush.bf16.msra.mxu0 %v3001
  %4929 = vmatpush.bf16.msra.mxu0 %v2998
  %4930 = vmatmul.bf16.gmra.mxu0 %v945
  %v4931 = vpop.f32.mrf.mxu0
  %v4932 = vadd.f32 %v4913, %v4931
  %v4933 = vpop.f32.mrf.mxu0
  %v4934 = vadd.f32 %v4915, %v4933
  %4935 = vmatmul.bf16.gmra.mxu0 %v968
  %v4936 = vpop.f32.mrf.mxu0
  %v4937 = vadd.f32 %v4918, %v4936
  %v4938 = vpop.f32.mrf.mxu0
  %v4939 = vadd.f32 %v4920, %v4938
  %4940 = vdwg.mxu0
  %4941 = vmatpush.bf16.msra.mxu0 %v3043
  %4942 = vmatpush.bf16.msra.mxu0 %v3040
  %4943 = vmatpush.bf16.msra.mxu0 %v3037
  %4944 = vmatpush.bf16.msra.mxu0 %v3034
  %4945 = vmatpush.bf16.msra.mxu0 %v3031
  %4946 = vmatpush.bf16.msra.mxu0 %v3028
  %4947 = vmatpush.bf16.msra.mxu0 %v3025
  %4948 = vmatpush.bf16.msra.mxu0 %v3022
  %4949 = vmatmul.bf16.gmra.mxu0 %v946
  %v4950 = vpop.f32.mrf.mxu0
  %v4951 = vadd.f32 %v4932, %v4950
  %v4952 = vpop.f32.mrf.mxu0
  %v4953 = vadd.f32 %v4934, %v4952
  %4954 = vmatmul.bf16.gmra.mxu0 %v969
  %v4955 = vpop.f32.mrf.mxu0
  %v4956 = vadd.f32 %v4937, %v4955
  %v4957 = vpop.f32.mrf.mxu0
  %v4958 = vadd.f32 %v4939, %v4957
  %4959 = vdwg.mxu0
  %4960 = vmatpush.bf16.msra.mxu0 %v3067
  %4961 = vmatpush.bf16.msra.mxu0 %v3064
  %4962 = vmatpush.bf16.msra.mxu0 %v3061
  %4963 = vmatpush.bf16.msra.mxu0 %v3058
  %4964 = vmatpush.bf16.msra.mxu0 %v3055
  %4965 = vmatpush.bf16.msra.mxu0 %v3052
  %4966 = vmatpush.bf16.msra.mxu0 %v3049
  %4967 = vmatpush.bf16.msra.mxu0 %v3046
  %4968 = vmatmul.bf16.gmra.mxu0 %v947
  %v4969 = vpop.f32.mrf.mxu0
  %v4970 = vadd.f32 %v4951, %v4969
  %v4971 = vpop.f32.mrf.mxu0
  %v4972 = vadd.f32 %v4953, %v4971
  %4973 = vmatmul.bf16.gmra.mxu0 %v970
  %v4974 = vpop.f32.mrf.mxu0
  %v4975 = vadd.f32 %v4956, %v4974
  %v4976 = vpop.f32.mrf.mxu0
  %v4977 = vadd.f32 %v4958, %v4976
  %4978 = vdwg.mxu0
  %4979 = vmatpush.bf16.msra.mxu0 %v3091
  %4980 = vmatpush.bf16.msra.mxu0 %v3088
  %4981 = vmatpush.bf16.msra.mxu0 %v3085
  %4982 = vmatpush.bf16.msra.mxu0 %v3082
  %4983 = vmatpush.bf16.msra.mxu0 %v3079
  %4984 = vmatpush.bf16.msra.mxu0 %v3076
  %4985 = vmatpush.bf16.msra.mxu0 %v3073
  %4986 = vmatpush.bf16.msra.mxu0 %v3070
  %4987 = vmatmul.bf16.gmra.mxu0 %v948
  %v4988 = vpop.f32.mrf.mxu0
  %v4989 = vadd.f32 %v4970, %v4988
  %v4990 = vpop.f32.mrf.mxu0
  %v4991 = vadd.f32 %v4972, %v4990
  %4992 = vmatmul.bf16.gmra.mxu0 %v971
  %v4993 = vpop.f32.mrf.mxu0
  %v4994 = vadd.f32 %v4975, %v4993
  %v4995 = vpop.f32.mrf.mxu0
  %v4996 = vadd.f32 %v4977, %v4995
  %4997 = vdwg.mxu0
  %4998 = vmatpush.bf16.msra.mxu0 %v3115
  %4999 = vmatpush.bf16.msra.mxu0 %v3112
  %5000 = vmatpush.bf16.msra.mxu0 %v3109
  %5001 = vmatpush.bf16.msra.mxu0 %v3106
  %5002 = vmatpush.bf16.msra.mxu0 %v3103
  %5003 = vmatpush.bf16.msra.mxu0 %v3100
  %5004 = vmatpush.bf16.msra.mxu0 %v3097
  %5005 = vmatpush.bf16.msra.mxu0 %v3094
  %5006 = vmatmul.bf16.gmra.mxu0 %v949
  %v5007 = vpop.f32.mrf.mxu0
  %v5008 = vadd.f32 %v4989, %v5007
  %v5009 = vpop.f32.mrf.mxu0
  %v5010 = vadd.f32 %v4991, %v5009
  %5011 = vmatmul.bf16.gmra.mxu0 %v972
  %v5012 = vpop.f32.mrf.mxu0
  %v5013 = vadd.f32 %v4994, %v5012
  %v5014 = vpop.f32.mrf.mxu0
  %v5015 = vadd.f32 %v4996, %v5014
  %5016 = vdwg.mxu0
  %5017 = vmatpush.bf16.msra.mxu0 %v3139
  %5018 = vmatpush.bf16.msra.mxu0 %v3136
  %5019 = vmatpush.bf16.msra.mxu0 %v3133
  %5020 = vmatpush.bf16.msra.mxu0 %v3130
  %5021 = vmatpush.bf16.msra.mxu0 %v3127
  %5022 = vmatpush.bf16.msra.mxu0 %v3124
  %5023 = vmatpush.bf16.msra.mxu0 %v3121
  %5024 = vmatpush.bf16.msra.mxu0 %v3118
  %5025 = vmatmul.bf16.gmra.mxu0 %v950
  %v5026 = vpop.f32.mrf.mxu0
  %v5027 = vadd.f32 %v5008, %v5026
  %v5028 = vpop.f32.mrf.mxu0
  %v5029 = vadd.f32 %v5010, %v5028
  %5030 = vmatmul.bf16.gmra.mxu0 %v973
  %v5031 = vpop.f32.mrf.mxu0
  %v5032 = vadd.f32 %v5013, %v5031
  %v5033 = vpop.f32.mrf.mxu0
  %v5034 = vadd.f32 %v5015, %v5033
  %5035 = vdwg.mxu0
  %5036 = vmatpush.bf16.msra.mxu0 %v3163
  %5037 = vmatpush.bf16.msra.mxu0 %v3160
  %5038 = vmatpush.bf16.msra.mxu0 %v3157
  %5039 = vmatpush.bf16.msra.mxu0 %v3154
  %5040 = vmatpush.bf16.msra.mxu0 %v3151
  %5041 = vmatpush.bf16.msra.mxu0 %v3148
  %5042 = vmatpush.bf16.msra.mxu0 %v3145
  %5043 = vmatpush.bf16.msra.mxu0 %v3142
  %5044 = vmatmul.bf16.gmra.mxu0 %v951
  %v5045 = vpop.f32.mrf.mxu0
  %v5046 = vadd.f32 %v5027, %v5045
  %v5047 = vpop.f32.mrf.mxu0
  %v5048 = vadd.f32 %v5029, %v5047
  %5049 = vmatmul.bf16.gmra.mxu0 %v974
  %v5050 = vpop.f32.mrf.mxu0
  %v5051 = vadd.f32 %v5032, %v5050
  %v5052 = vpop.f32.mrf.mxu0
  %v5053 = vadd.f32 %v5034, %v5052
  %5054 = vdwg.mxu0
  %5055 = vmatpush.bf16.msra.mxu0 %v3187
  %5056 = vmatpush.bf16.msra.mxu0 %v3184
  %5057 = vmatpush.bf16.msra.mxu0 %v3181
  %5058 = vmatpush.bf16.msra.mxu0 %v3178
  %5059 = vmatpush.bf16.msra.mxu0 %v3175
  %5060 = vmatpush.bf16.msra.mxu0 %v3172
  %5061 = vmatpush.bf16.msra.mxu0 %v3169
  %5062 = vmatpush.bf16.msra.mxu0 %v3166
  %5063 = vmatmul.bf16.gmra.mxu0 %v952
  %v5064 = vpop.f32.mrf.mxu0
  %v5065 = vadd.f32 %v5046, %v5064
  %v5066 = vpop.f32.mrf.mxu0
  %v5067 = vadd.f32 %v5048, %v5066
  %5068 = vmatmul.bf16.gmra.mxu0 %v975
  %v5069 = vpop.f32.mrf.mxu0
  %v5070 = vadd.f32 %v5051, %v5069
  %v5071 = vpop.f32.mrf.mxu0
  %v5072 = vadd.f32 %v5053, %v5071
  %5073 = vdwg.mxu0
  %5074 = vmatpush.bf16.msra.mxu0 %v3211
  %5075 = vmatpush.bf16.msra.mxu0 %v3208
  %5076 = vmatpush.bf16.msra.mxu0 %v3205
  %5077 = vmatpush.bf16.msra.mxu0 %v3202
  %5078 = vmatpush.bf16.msra.mxu0 %v3199
  %5079 = vmatpush.bf16.msra.mxu0 %v3196
  %5080 = vmatpush.bf16.msra.mxu0 %v3193
  %5081 = vmatpush.bf16.msra.mxu0 %v3190
  %5082 = vmatmul.bf16.gmra.mxu0 %v953
  %v5083 = vpop.f32.mrf.mxu0
  %v5084 = vadd.f32 %v5065, %v5083
  %v5085 = vpop.f32.mrf.mxu0
  %v5086 = vadd.f32 %v5067, %v5085
  %5087 = vmatmul.bf16.gmra.mxu0 %v976
  %v5088 = vpop.f32.mrf.mxu0
  %v5089 = vadd.f32 %v5070, %v5088
  %v5090 = vpop.f32.mrf.mxu0
  %v5091 = vadd.f32 %v5072, %v5090
  %5092 = vdwg.mxu0
  %5093 = vmatpush.bf16.msra.mxu0 %v3235
  %5094 = vmatpush.bf16.msra.mxu0 %v3232
  %5095 = vmatpush.bf16.msra.mxu0 %v3229
  %5096 = vmatpush.bf16.msra.mxu0 %v3226
  %5097 = vmatpush.bf16.msra.mxu0 %v3223
  %5098 = vmatpush.bf16.msra.mxu0 %v3220
  %5099 = vmatpush.bf16.msra.mxu0 %v3217
  %5100 = vmatpush.bf16.msra.mxu0 %v3214
  %5101 = vmatmul.bf16.gmra.mxu0 %v954
  %v5102 = vpop.f32.mrf.mxu0
  %v5103 = vadd.f32 %v5084, %v5102
  %v5104 = vpop.f32.mrf.mxu0
  %v5105 = vadd.f32 %v5086, %v5104
  %5106 = vmatmul.bf16.gmra.mxu0 %v977
  %v5107 = vpop.f32.mrf.mxu0
  %v5108 = vadd.f32 %v5089, %v5107
  %v5109 = vpop.f32.mrf.mxu0
  %v5110 = vadd.f32 %v5091, %v5109
  %5111 = vdwg.mxu0
  %5112 = vmatpush.bf16.msra.mxu0 %v3259
  %5113 = vmatpush.bf16.msra.mxu0 %v3256
  %5114 = vmatpush.bf16.msra.mxu0 %v3253
  %5115 = vmatpush.bf16.msra.mxu0 %v3250
  %5116 = vmatpush.bf16.msra.mxu0 %v3247
  %5117 = vmatpush.bf16.msra.mxu0 %v3244
  %5118 = vmatpush.bf16.msra.mxu0 %v3241
  %5119 = vmatpush.bf16.msra.mxu0 %v3238
  %5120 = vmatmul.bf16.gmra.mxu0 %v955
  %v5121 = vpop.f32.mrf.mxu0
  %v5122 = vadd.f32 %v5103, %v5121
  %v5123 = vpop.f32.mrf.mxu0
  %v5124 = vadd.f32 %v5105, %v5123
  %5125 = vmatmul.bf16.gmra.mxu0 %v978
  %v5126 = vpop.f32.mrf.mxu0
  %v5127 = vadd.f32 %v5108, %v5126
  %v5128 = vpop.f32.mrf.mxu0
  %v5129 = vadd.f32 %v5110, %v5128
  %5130 = vdwg.mxu0
  %5131 = vmatpush.bf16.msra.mxu0 %v3283
  %5132 = vmatpush.bf16.msra.mxu0 %v3280
  %5133 = vmatpush.bf16.msra.mxu0 %v3277
  %5134 = vmatpush.bf16.msra.mxu0 %v3274
  %5135 = vmatpush.bf16.msra.mxu0 %v3271
  %5136 = vmatpush.bf16.msra.mxu0 %v3268
  %5137 = vmatpush.bf16.msra.mxu0 %v3265
  %5138 = vmatpush.bf16.msra.mxu0 %v3262
  %5139 = vmatmul.bf16.gmra.mxu0 %v956
  %v5140 = vpop.f32.mrf.mxu0
  %v5141 = vadd.f32 %v5122, %v5140
  %v5142 = vpop.f32.mrf.mxu0
  %v5143 = vadd.f32 %v5124, %v5142
  %5144 = vmatmul.bf16.gmra.mxu0 %v979
  %v5145 = vpop.f32.mrf.mxu0
  %v5146 = vadd.f32 %v5127, %v5145
  %v5147 = vpop.f32.mrf.mxu0
  %v5148 = vadd.f32 %v5129, %v5147
  %5149 = vdwg.mxu0
  %5150 = vmatpush.bf16.msra.mxu0 %v3307
  %5151 = vmatpush.bf16.msra.mxu0 %v3304
  %5152 = vmatpush.bf16.msra.mxu0 %v3301
  %5153 = vmatpush.bf16.msra.mxu0 %v3298
  %5154 = vmatpush.bf16.msra.mxu0 %v3295
  %5155 = vmatpush.bf16.msra.mxu0 %v3292
  %5156 = vmatpush.bf16.msra.mxu0 %v3289
  %5157 = vmatpush.bf16.msra.mxu0 %v3286
  %5158 = vmatmul.bf16.gmra.mxu0 %v957
  %v5159 = vpop.f32.mrf.mxu0
  %v5160 = vadd.f32 %v5141, %v5159
  %v5161 = vpop.f32.mrf.mxu0
  %v5162 = vadd.f32 %v5143, %v5161
  %5163 = vmatmul.bf16.gmra.mxu0 %v980
  %v5164 = vpop.f32.mrf.mxu0
  %v5165 = vadd.f32 %v5146, %v5164
  %v5166 = vpop.f32.mrf.mxu0
  %v5167 = vadd.f32 %v5148, %v5166
  %5168 = vdwg.mxu0
  %5169 = vmatpush.bf16.msra.mxu0 %v3331
  %5170 = vmatpush.bf16.msra.mxu0 %v3328
  %5171 = vmatpush.bf16.msra.mxu0 %v3325
  %5172 = vmatpush.bf16.msra.mxu0 %v3322
  %5173 = vmatpush.bf16.msra.mxu0 %v3319
  %5174 = vmatpush.bf16.msra.mxu0 %v3316
  %5175 = vmatpush.bf16.msra.mxu0 %v3313
  %5176 = vmatpush.bf16.msra.mxu0 %v3310
  %5177 = vmatmul.bf16.gmra.mxu0 %v958
  %v5178 = vpop.f32.mrf.mxu0
  %v5179 = vadd.f32 %v5160, %v5178
  %v5180 = vpop.f32.mrf.mxu0
  %v5181 = vadd.f32 %v5162, %v5180
  %5182 = vmatmul.bf16.gmra.mxu0 %v981
  %v5183 = vpop.f32.mrf.mxu0
  %v5184 = vadd.f32 %v5165, %v5183
  %v5185 = vpop.f32.mrf.mxu0
  %v5186 = vadd.f32 %v5167, %v5185
  %5187 = vdwg.mxu0
  %5188 = vmatpush.bf16.msra.mxu0 %v3355
  %5189 = vmatpush.bf16.msra.mxu0 %v3352
  %5190 = vmatpush.bf16.msra.mxu0 %v3349
  %5191 = vmatpush.bf16.msra.mxu0 %v3346
  %5192 = vmatpush.bf16.msra.mxu0 %v3343
  %5193 = vmatpush.bf16.msra.mxu0 %v3340
  %5194 = vmatpush.bf16.msra.mxu0 %v3337
  %5195 = vmatpush.bf16.msra.mxu0 %v3334
  %5196 = vmatmul.bf16.gmra.mxu0 %v959
  %v5197 = vpop.f32.mrf.mxu0
  %v5198 = vadd.f32 %v5179, %v5197
  %v5199 = vpop.f32.mrf.mxu0
  %v5200 = vadd.f32 %v5181, %v5199
  %5201 = vmatmul.bf16.gmra.mxu0 %v982
  %v5202 = vpop.f32.mrf.mxu0
  %v5203 = vadd.f32 %v5184, %v5202
  %v5204 = vpop.f32.mrf.mxu0
  %v5205 = vadd.f32 %v5186, %v5204
  %5206 = vdwg.mxu0
  %5207 = vmatpush.bf16.msra.mxu0 0
  %5208 = vmatpush.bf16.msra.mxu0 0
  %5209 = vmatpush.bf16.msra.mxu0 0
  %5210 = vmatpush.bf16.msra.mxu0 0
  %5211 = vmatpush.bf16.msra.mxu0 %v3367
  %5212 = vmatpush.bf16.msra.mxu0 %v3364
  %5213 = vmatpush.bf16.msra.mxu0 %v3361
  %5214 = vmatpush.bf16.msra.mxu0 %v3358
  %5215 = vmatmul.bf16.gmra.mxu0 %v3910
  %v5216 = vpop.f32.mrf.mxu0
  %v5217 = vadd.f32 %v5198, %v5216
  %v5218 = vpop.f32.mrf.mxu0
  %v5219 = vadd.f32 %v5200, %v5218
  %5220 = vmatmul.bf16.gmra.mxu0 %v3913
  %v5221 = vpop.f32.mrf.mxu0
  %v5222 = vadd.f32 %v5203, %v5221
  %v5223 = vpop.f32.mrf.mxu0
  %v5224 = vadd.f32 %v5205, %v5223
  %5225 = vdwg.mxu0
  %v5226 = vld [vmem:[%s4] sm:$0x7]
  %v5228 = vperm.slane %v5226, 0
  %v5229 = vperm.slane %v5226, 1
  %v5230 = vperm.slane %v5226, 2
  %v5234 = vmul.f32 %v4343, %v5228
  %v5235 = vmul.f32 %v4780, %v5229
  %v5236 = vmul.f32 %v5217, %v5230
  %v5237 = vmul.f32 %v4345, %v5228
  %v5238 = vmul.f32 %v4782, %v5229
  %v5239 = vmul.f32 %v5219, %v5230
  %v5240 = vmul.f32 %v4348, %v5228
  %v5241 = vmul.f32 %v4785, %v5229
  %v5242 = vmul.f32 %v5222, %v5230
  %v5243 = vmul.f32 %v4350, %v5228
  %v5244 = vmul.f32 %v4787, %v5229
  %v5245 = vmul.f32 %v5224, %v5230
  %v5246 = vld [vmem:[%s5] sm:$0x7]
  %v5248 = vperm.slane %v5246, 0
  %v5249 = vperm.slane %v5246, 1
  %v5250 = vperm.slane %v5246, 2
  %v5254 = vadd.f32 %v5234, %v5248
  %v5255 = vadd.f32 %v5235, %v5249
  %v5256 = vadd.f32 %v5236, %v5250
  %v5257 = vadd.f32 %v5237, %v5248
  %v5258 = vadd.f32 %v5238, %v5249
  %v5259 = vadd.f32 %v5239, %v5250
  %v5260 = vadd.f32 %v5240, %v5248
  %v5261 = vadd.f32 %v5241, %v5249
  %v5262 = vadd.f32 %v5242, %v5250
  %v5263 = vadd.f32 %v5243, %v5248
  %v5264 = vadd.f32 %v5244, %v5249
  %v5265 = vadd.f32 %v5245, %v5250
  %v5266 = vmax.f32 %v5254, 0.0
  %v5267 = vmax.f32 %v5255, 0.0
  %v5268 = vmax.f32 %v5256, 0.0
  %v5269 = vmax.f32 %v5257, 0.0
  %v5270 = vmax.f32 %v5258, 0.0
  %v5271 = vmax.f32 %v5259, 0.0
  %v5272 = vmax.f32 %v5260, 0.0
  %v5273 = vmax.f32 %v5261, 0.0
  %v5274 = vmax.f32 %v5262, 0.0
  %v5275 = vmax.f32 %v5263, 0.0
  %v5276 = vmax.f32 %v5264, 0.0
  %v5277 = vmax.f32 %v5265, 0.0
  %5278 = vst [vmem:[%s8] sm:$0xff] %v5266
  %5279 = vst [vmem:[%s8 + $0x8] sm:$0xff] %v5267
  %5280 = vst [vmem:[%s8 + $0x10] sm:$0xff] %v5268
  %5281 = vst [vmem:[%s8 + $0x48] sm:$0xff] %v5269
  %5282 = vst [vmem:[%s8 + $0x50] sm:$0xff] %v5270
  %5283 = vst [vmem:[%s8 + $0x58] sm:$0xff] %v5271
  %5284 = vst [vmem:[%s8 + $0x90] sm:$0xff] %v5272
  %5285 = vst [vmem:[%s8 + $0x98] sm:$0xff] %v5273
  %5286 = vst [vmem:[%s8 + $0xa0] sm:$0xff] %v5274
  %5287 = vst [vmem:[%s8 + $0xd8] sm:$0xff] %v5275
  %5288 = vst [vmem:[%s8 + $0xe0] sm:$0xff] %v5276
  %5289 = vst [vmem:[%s8 + $0xe8] sm:$0xff] %v5277
  %v5290 = vld [vmem:[%s1] sm:$0xff]
  %v5291 = vld [vmem:[%s1 + $0x8] sm:$0xff]
  %v5292 = vld [vmem:[%s1 + $0x10] sm:$0xff]
  %v5293 = vld [vmem:[%s1 + $0x18] sm:$0xff]
  %v5294 = vld [vmem:[%s1 + $0x20] sm:$0xff]
  %v5295 = vld [vmem:[%s1 + $0x28] sm:$0xff]
  %v5296 = vld [vmem:[%s1 + $0x30] sm:$0xff]
  %v5297 = vld [vmem:[%s1 + $0x38] sm:$0xff]
  %v5298 = vld [vmem:[%s1 + $0x40] sm:$0xff]
  %v5299 = vld [vmem:[%s1 + $0x48] sm:$0xff]
  %v5300 = vld [vmem:[%s1 + $0x50] sm:$0xff]
  %v5301 = vld [vmem:[%s1 + $0x58] sm:$0xff]
  %v5302 = vld [vmem:[%s1 + $0x60] sm:$0xff]
  %v5303 = vld [vmem:[%s1 + $0x68] sm:$0xff]
  %v5304 = vld [vmem:[%s1 + $0x70] sm:$0xff]
  %v5305 = vld [vmem:[%s1 + $0x78] sm:$0xff]
  %v5306 = vld [vmem:[%s1 + $0x80] sm:$0xff]
  %v5307 = vld [vmem:[%s1 + $0x88] sm:$0xff]
  %v5308 = vld [vmem:[%s1 + $0x90] sm:$0xff]
  %v5309 = vld [vmem:[%s1 + $0x98] sm:$0xff]
  %v5310 = vld [vmem:[%s1 + $0xa0] sm:$0xff]
  %v5311 = vld [vmem:[%s1 + $0xa8] sm:$0xff]
  %v5312 = vld [vmem:[%s1 + $0xb0] sm:$0xff]
  %v5313 = vld [vmem:[%s1 + $0xb8] sm:$0xff]
  %v5314 = vld [vmem:[%s1 + $0xc0] sm:$0xff]
  %v5315 = vld [vmem:[%s1 + $0xc8] sm:$0xff]
  %v5316 = vld [vmem:[%s1 + $0xd0] sm:$0xff]
  %v5317 = vld [vmem:[%s1 + $0xd8] sm:$0xff]
  %v5318 = vld [vmem:[%s1 + $0xe0] sm:$0xff]
  %v5319 = vld [vmem:[%s1 + $0xe8] sm:$0xff]
  %v5320 = vld [vmem:[%s1 + $0xf0] sm:$0xff]
  %v5321 = vld [vmem:[%s1 + $0xf8] sm:$0xff]
  %v5322 = vld [vmem:[%s1 + $0x100] sm:$0xff]
  %v5323 = vld [vmem:[%s1 + $0x108] sm:$0xff]
  %v5324 = vld [vmem:[%s1 + $0x110] sm:$0xff]
  %v5325 = vld [vmem:[%s1 + $0x118] sm:$0xff]
  %v5326 = vld [vmem:[%s3] sm:$0xff]
  %v5327 = vld [vmem:[%s3 + $0x8] sm:$0xf]
  %v5328 = vld [vmem:[%s3 + $0xc] sm:$0xff]
  %v5329 = vld [vmem:[%s3 + $0x14] sm:$0xf]
  %v5330 = vld [vmem:[%s3 + $0x18] sm:$0xff]
  %v5331 = vld [vmem:[%s3 + $0x20] sm:$0xf]
  %v5332 = vld [vmem:[%s3 + $0x24] sm:$0xff]
  %v5333 = vld [vmem:[%s3 + $0x2c] sm:$0xf]
  %v5334 = vld [vmem:[%s3 + $0x30] sm:$0xff]
  %v5335 = vld [vmem:[%s3 + $0x38] sm:$0xf]
  %v5336 = vld [vmem:[%s3 + $0x3c] sm:$0xff]
  %v5337 = vld [vmem:[%s3 + $0x44] sm:$0xf]
  %v5338 = vld [vmem:[%s3 + $0x48] sm:$0xff]
  %v5339 = vld [vmem:[%s3 + $0x50] sm:$0xf]
  %v5340 = vld [vmem:[%s3 + $0x54] sm:$0xff]
  %v5341 = vld [vmem:[%s3 + $0x5c] sm:$0xf]
  %v5342 = vld [vmem:[%s3 + $0x60] sm:$0xff]
  %v5343 = vld [vmem:[%s3 + $0x68] sm:$0xf]
  %v5344 = vld [vmem:[%s3 + $0x6c] sm:$0xff]
  %v5345 = vld [vmem:[%s3 + $0x74] sm:$0xf]
  %v5346 = vld [vmem:[%s3 + $0x78] sm:$0xff]
  %v5347 = vld [vmem:[%s3 + $0x80] sm:$0xf]
  %v5348 = vld [vmem:[%s3 + $0x84] sm:$0xff]
  %v5349 = vld [vmem:[%s3 + $0x8c] sm:$0xf]
  %v5350 = vld [vmem:[%s3 + $0x90] sm:$0xff]
  %v5351 = vld [vmem:[%s3 + $0x98] sm:$0xf]
  %v5352 = vld [vmem:[%s3 + $0x9c] sm:$0xff]
  %v5353 = vld [vmem:[%s3 + $0xa4] sm:$0xf]
  %v5354 = vld [vmem:[%s3 + $0xa8] sm:$0xff]
  %v5355 = vld [vmem:[%s3 + $0xb0] sm:$0xf]
  %v5356 = vld [vmem:[%s3 + $0xb4] sm:$0xff]
  %v5357 = vld [vmem:[%s3 + $0xbc] sm:$0xf]
  %v5358 = vld [vmem:[%s3 + $0xc0] sm:$0xff]
  %v5359 = vld [vmem:[%s3 + $0xc8] sm:$0xf]
  %v5360 = vld [vmem:[%s3 + $0xcc] sm:$0xff]
  %v5361 = vld [vmem:[%s3 + $0xd4] sm:$0xf]
  %v5362 = vld [vmem:[%s3 + $0xd8] sm:$0xff]
  %v5363 = vld [vmem:[%s3 + $0xe0] sm:$0xf]
  %v5364 = vld [vmem:[%s3 + $0xe4] sm:$0xff]
  %v5365 = vld [vmem:[%s3 + $0xec] sm:$0xf]
  %v5366 = vld [vmem:[%s3 + $0xf0] sm:$0xff]
  %v5367 = vld [vmem:[%s3 + $0xf8] sm:$0xf]
  %v5368 = vld [vmem:[%s3 + $0xfc] sm:$0xff]
  %v5369 = vld [vmem:[%s3 + $0x104] sm:$0xf]
  %v5370 = vld [vmem:[%s3 + $0x108] sm:$0xff]
  %v5371 = vld [vmem:[%s3 + $0x110] sm:$0xf]
  %v5372 = vld [vmem:[%s3 + $0x114] sm:$0xff]
  %v5373 = vld [vmem:[%s3 + $0x11c] sm:$0xf]
  %v5374 = vld [vmem:[%s3 + $0x120] sm:$0xff]
  %v5375 = vld [vmem:[%s3 + $0x128] sm:$0xf]
  %v5376 = vld [vmem:[%s3 + $0x12c] sm:$0xff]
  %v5377 = vld [vmem:[%s3 + $0x134] sm:$0xf]
  %v5378 = vld [vmem:[%s3 + $0x138] sm:$0xff]
  %v5379 = vld [vmem:[%s3 + $0x140] sm:$0xf]
  %v5380 = vld [vmem:[%s3 + $0x144] sm:$0xff]
  %v5381 = vld [vmem:[%s3 + $0x14c] sm:$0xf]
  %v5382 = vld [vmem:[%s3 + $0x150] sm:$0xff]
  %v5383 = vld [vmem:[%s3 + $0x158] sm:$0xf]
  %v5384 = vld [vmem:[%s3 + $0x15c] sm:$0xff]
  %v5385 = vld [vmem:[%s3 + $0x164] sm:$0xf]
  %v5386 = vld [vmem:[%s3 + $0x168] sm:$0xff]
  %v5387 = vld [vmem:[%s3 + $0x170] sm:$0xf]
  %v5388 = vld [vmem:[%s3 + $0x174] sm:$0xff]
  %v5389 = vld [vmem:[%s3 + $0x17c] sm:$0xf]
  %v5390 = vld [vmem:[%s3 + $0x180] sm:$0xff]
  %v5391 = vld [vmem:[%s3 + $0x188] sm:$0xf]
  %v5392 = vld [vmem:[%s3 + $0x18c] sm:$0xff]
  %v5393 = vld [vmem:[%s3 + $0x194] sm:$0xf]
  %v5394 = vld [vmem:[%s3 + $0x198] sm:$0xff]
  %v5395 = vld [vmem:[%s3 + $0x1a0] sm:$0xf]
  %v5396 = vld [vmem:[%s3 + $0x1a4] sm:$0xff]
  %v5397 = vld [vmem:[%s3 + $0x1ac] sm:$0xf]
  %v5398 = vld [vmem:[%s3 + $0x1b0] sm:$0xff]
  %v5399 = vld [vmem:[%s3 + $0x1b8] sm:$0xf]
  %v5400 = vld [vmem:[%s3 + $0x1bc] sm:$0xff]
  %v5401 = vld [vmem:[%s3 + $0x1c4] sm:$0xf]
  %v5402 = vld [vmem:[%s3 + $0x1c8] sm:$0xff]
  %v5403 = vld [vmem:[%s3 + $0x1d0] sm:$0xf]
  %v5404 = vld [vmem:[%s3 + $0x1d4] sm:$0xff]
  %v5405 = vld [vmem:[%s3 + $0x1dc] sm:$0xf]
  %v5406 = vld [vmem:[%s3 + $0x1e0] sm:$0xff]
  %v5407 = vld [vmem:[%s3 + $0x1e8] sm:$0xf]
  %v5408 = vld [vmem:[%s3 + $0x1ec] sm:$0xff]
  %v5409 = vld [vmem:[%s3 + $0x1f4] sm:$0xf]
  %v5410 = vld [vmem:[%s3 + $0x1f8] sm:$0xff]
  %v5411 = vld [vmem:[%s3 + $0x200] sm:$0xf]
  %v5412 = vld [vmem:[%s3 + $0x204] sm:$0xff]
  %v5413 = vld [vmem:[%s3 + $0x20c] sm:$0xf]
  %v5414 = vld [vmem:[%s3 + $0x210] sm:$0xff]
  %v5415 = vld [vmem:[%s3 + $0x218] sm:$0xf]
  %v5416 = vld [vmem:[%s3 + $0x21c] sm:$0xff]
  %v5417 = vld [vmem:[%s3 + $0x224] sm:$0xf]
  %v5418 = vld [vmem:[%s3 + $0x228] sm:$0xff]
  %v5419 = vld [vmem:[%s3 + $0x230] sm:$0xf]
  %v5420 = vld [vmem:[%s3 + $0x234] sm:$0xff]
  %v5421 = vld [vmem:[%s3 + $0x23c] sm:$0xf]
  %v5422 = vld [vmem:[%s3 + $0x240] sm:$0xff]
  %v5423 = vld [vmem:[%s3 + $0x248] sm:$0xf]
  %v5424 = vld [vmem:[%s3 + $0x24c] sm:$0xff]
  %v5425 = vld [vmem:[%s3 + $0x254] sm:$0xf]
  %v5426 = vld [vmem:[%s3 + $0x258] sm:$0xff]
  %v5427 = vld [vmem:[%s3 + $0x260] sm:$0xf]
  %v5428 = vld [vmem:[%s3 + $0x264] sm:$0xff]
  %v5429 = vld [vmem:[%s3 + $0x26c] sm:$0xf]
  %v5430 = vld [vmem:[%s3 + $0x270] sm:$0xff]
  %v5431 = vld [vmem:[%s3 + $0x278] sm:$0xf]
  %v5432 = vld [vmem:[%s3 + $0x27c] sm:$0xff]
  %v5433 = vld [vmem:[%s3 + $0x284] sm:$0xf]
  %v5434 = vld [vmem:[%s3 + $0x288] sm:$0xff]
  %v5435 = vld [vmem:[%s3 + $0x290] sm:$0xf]
  %v5436 = vld [vmem:[%s3 + $0x294] sm:$0xff]
  %v5437 = vld [vmem:[%s3 + $0x29c] sm:$0xf]
  %v5438 = vld [vmem:[%s3 + $0x2a0] sm:$0xff]
  %v5439 = vld [vmem:[%s3 + $0x2a8] sm:$0xf]
  %v5440 = vld [vmem:[%s3 + $0x2ac] sm:$0xff]
  %v5441 = vld [vmem:[%s3 + $0x2b4] sm:$0xf]
  %v5442 = vld [vmem:[%s3 + $0x2b8] sm:$0xff]
  %v5443 = vld [vmem:[%s3 + $0x2c0] sm:$0xf]
  %v5444 = vld [vmem:[%s3 + $0x2c4] sm:$0xff]
  %v5445 = vld [vmem:[%s3 + $0x2cc] sm:$0xf]
  %v5446 = vld [vmem:[%s3 + $0x2d0] sm:$0xff]
  %v5447 = vld [vmem:[%s3 + $0x2d8] sm:$0xf]
  %v5448 = vld [vmem:[%s3 + $0x2dc] sm:$0xff]
  %v5449 = vld [vmem:[%s3 + $0x2e4] sm:$0xf]
  %v5450 = vld [vmem:[%s3 + $0x2e8] sm:$0xff]
  %v5451 = vld [vmem:[%s3 + $0x2f0] sm:$0xf]
  %v5452 = vld [vmem:[%s3 + $0x2f4] sm:$0xff]
  %v5453 = vld [vmem:[%s3 + $0x2fc] sm:$0xf]
  %v5454 = vld [vmem:[%s3 + $0x300] sm:$0xff]
  %v5455 = vld [vmem:[%s3 + $0x308] sm:$0xf]
  %v5456 = vld [vmem:[%s3 + $0x30c] sm:$0xff]
  %v5457 = vld [vmem:[%s3 + $0x314] sm:$0xf]
  %v5458 = vld [vmem:[%s3 + $0x318] sm:$0xff]
  %v5459 = vld [vmem:[%s3 + $0x320] sm:$0xf]
  %v5460 = vld [vmem:[%s3 + $0x324] sm:$0xff]
  %v5461 = vld [vmem:[%s3 + $0x32c] sm:$0xf]
  %v5462 = vld [vmem:[%s3 + $0x330] sm:$0xff]
  %v5463 = vld [vmem:[%s3 + $0x338] sm:$0xf]
  %v5464 = vld [vmem:[%s3 + $0x33c] sm:$0xff]
  %v5465 = vld [vmem:[%s3 + $0x344] sm:$0xf]
  %v5466 = vld [vmem:[%s3 + $0x348] sm:$0xff]
  %v5467 = vld [vmem:[%s3 + $0x350] sm:$0xf]
  %v5468 = vld [vmem:[%s3 + $0x354] sm:$0xff]
  %v5469 = vld [vmem:[%s3 + $0x35c] sm:$0xf]
  %v5470 = vld [vmem:[%s3 + $0x360] sm:$0xff]
  %v5471 = vld [vmem:[%s3 + $0x368] sm:$0xf]
  %v5472 = vld [vmem:[%s3 + $0x36c] sm:$0xff]
  %v5473 = vld [vmem:[%s3 + $0x374] sm:$0xf]
  %v5474 = vld [vmem:[%s3 + $0x378] sm:$0xff]
  %v5475 = vld [vmem:[%s3 + $0x380] sm:$0xf]
  %v5476 = vld [vmem:[%s3 + $0x384] sm:$0xff]
  %v5477 = vld [vmem:[%s3 + $0x38c] sm:$0xf]
  %v5478 = vld [vmem:[%s3 + $0x390] sm:$0xff]
  %v5479 = vld [vmem:[%s3 + $0x398] sm:$0xf]
  %v5480 = vld [vmem:[%s3 + $0x39c] sm:$0xff]
  %v5481 = vld [vmem:[%s3 + $0x3a4] sm:$0xf]
  %v5482 = vld [vmem:[%s3 + $0x3a8] sm:$0xff]
  %v5483 = vld [vmem:[%s3 + $0x3b0] sm:$0xf]
  %v5484 = vld [vmem:[%s3 + $0x3b4] sm:$0xff]
  %v5485 = vld [vmem:[%s3 + $0x3bc] sm:$0xf]
  %v5486 = vld [vmem:[%s3 + $0x3c0] sm:$0xff]
  %v5487 = vld [vmem:[%s3 + $0x3c8] sm:$0xf]
  %v5488 = vld [vmem:[%s3 + $0x3cc] sm:$0xff]
  %v5489 = vld [vmem:[%s3 + $0x3d4] sm:$0xf]
  %v5490 = vld [vmem:[%s3 + $0x3d8] sm:$0xff]
  %v5491 = vld [vmem:[%s3 + $0x3e0] sm:$0xf]
  %v5492 = vld [vmem:[%s3 + $0x3e4] sm:$0xff]
  %v5493 = vld [vmem:[%s3 + $0x3ec] sm:$0xf]
  %v5494 = vld [vmem:[%s3 + $0x3f0] sm:$0xff]
  %v5495 = vld [vmem:[%s3 + $0x3f8] sm:$0xf]
  %v5496 = vld [vmem:[%s3 + $0x3fc] sm:$0xff]
  %v5497 = vld [vmem:[%s3 + $0x404] sm:$0xf]
  %v5498 = vld [vmem:[%s3 + $0x408] sm:$0xff]
  %v5499 = vld [vmem:[%s3 + $0x410] sm:$0xf]
  %v5500 = vld [vmem:[%s3 + $0x414] sm:$0xff]
  %v5501 = vld [vmem:[%s3 + $0x41c] sm:$0xf]
  %v5502 = vld [vmem:[%s3 + $0x420] sm:$0xff]
  %v5503 = vld [vmem:[%s3 + $0x428] sm:$0xf]
  %v5504 = vld [vmem:[%s3 + $0x42c] sm:$0xff]
  %v5505 = vld [vmem:[%s3 + $0x434] sm:$0xf]
  %v5506 = vld [vmem:[%s3 + $0x438] sm:$0xff]
  %v5507 = vld [vmem:[%s3 + $0x440] sm:$0xf]
  %v5508 = vld [vmem:[%s3 + $0x444] sm:$0xff]
  %v5509 = vld [vmem:[%s3 + $0x44c] sm:$0xf]
  %v5510 = vld [vmem:[%s3 + $0x450] sm:$0xff]
  %v5511 = vld [vmem:[%s3 + $0x458] sm:$0xf]
  %v5512 = vld [vmem:[%s3 + $0x45c] sm:$0xff]
  %v5513 = vld [vmem:[%s3 + $0x464] sm:$0xf]
  %v5514 = vld [vmem:[%s3 + $0x468] sm:$0xff]
  %v5515 = vld [vmem:[%s3 + $0x470] sm:$0xf]
  %v5516 = vld [vmem:[%s3 + $0x474] sm:$0xff]
  %v5517 = vld [vmem:[%s3 + $0x47c] sm:$0xf]
  %v5518 = vld [vmem:[%s3 + $0x480] sm:$0xff]
  %v5519 = vld [vmem:[%s3 + $0x488] sm:$0xf]
  %v5520 = vld [vmem:[%s3 + $0x48c] sm:$0xff]
  %v5521 = vld [vmem:[%s3 + $0x494] sm:$0xf]
  %v5522 = vld [vmem:[%s3 + $0x498] sm:$0xff]
  %v5523 = vld [vmem:[%s3 + $0x4a0] sm:$0xf]
  %v5524 = vld [vmem:[%s3 + $0x4a4] sm:$0xff]
  %v5525 = vld [vmem:[%s3 + $0x4ac] sm:$0xf]
  %v5526 = vld [vmem:[%s3 + $0x4b0] sm:$0xff]
  %v5527 = vld [vmem:[%s3 + $0x4b8] sm:$0xf]
  %v5528 = vld [vmem:[%s3 + $0x4bc] sm:$0xff]
  %v5529 = vld [vmem:[%s3 + $0x4c4] sm:$0xf]
  %v5530 = vld [vmem:[%s3 + $0x4c8] sm:$0xff]
  %v5531 = vld [vmem:[%s3 + $0x4d0] sm:$0xf]
  %v5532 = vld [vmem:[%s3 + $0x4d4] sm:$0xff]
  %v5533 = vld [vmem:[%s3 + $0x4dc] sm:$0xf]
  %v5534 = vld [vmem:[%s3 + $0x4e0] sm:$0xff]
  %v5535 = vld [vmem:[%s3 + $0x4e8] sm:$0xf]
  %v5536 = vld [vmem:[%s3 + $0x4ec] sm:$0xff]
  %v5537 = vld [vmem:[%s3 + $0x4f4] sm:$0xf]
  %v5538 = vld [vmem:[%s3 + $0x4f8] sm:$0xff]
  %v5539 = vld [vmem:[%s3 + $0x500] sm:$0xf]
  %v5540 = vld [vmem:[%s3 + $0x504] sm:$0xff]
  %v5541 = vld [vmem:[%s3 + $0x50c] sm:$0xf]
  %v5542 = vld [vmem:[%s3 + $0x510] sm:$0xff]
  %v5543 = vld [vmem:[%s3 + $0x518] sm:$0xf]
  %v5544 = vld [vmem:[%s3 + $0x51c] sm:$0xff]
  %v5545 = vld [vmem:[%s3 + $0x524] sm:$0xf]
  %v5546 = vld [vmem:[%s3 + $0x528] sm:$0xff]
  %v5547 = vld [vmem:[%s3 + $0x530] sm:$0xf]
  %v5548 = vld [vmem:[%s3 + $0x534] sm:$0xff]
  %v5549 = vld [vmem:[%s3 + $0x53c] sm:$0xf]
  %v5550 = vld [vmem:[%s3 + $0x540] sm:$0xff]
  %v5551 = vld [vmem:[%s3 + $0x548] sm:$0xf]
  %v5552 = vld [vmem:[%s3 + $0x54c] sm:$0xff]
  %v5553 = vld [vmem:[%s3 + $0x554] sm:$0xf]
  %v5554 = vld [vmem:[%s3 + $0x558] sm:$0xff]
  %v5555 = vld [vmem:[%s3 + $0x560] sm:$0xf]
  %v5556 = vld [vmem:[%s3 + $0x564] sm:$0xff]
  %v5557 = vld [vmem:[%s3 + $0x56c] sm:$0xf]
  %v5558 = vld [vmem:[%s3 + $0x570] sm:$0xff]
  %v5559 = vld [vmem:[%s3 + $0x578] sm:$0xf]
  %v5560 = vld [vmem:[%s3 + $0x57c] sm:$0xff]
  %v5561 = vld [vmem:[%s3 + $0x584] sm:$0xf]
  %v5562 = vld [vmem:[%s3 + $0x588] sm:$0xff]
  %v5563 = vld [vmem:[%s3 + $0x590] sm:$0xf]
  %v5564 = vld [vmem:[%s3 + $0x594] sm:$0xff]
  %v5565 = vld [vmem:[%s3 + $0x59c] sm:$0xf]
  %v5566 = vld [vmem:[%s3 + $0x5a0] sm:$0xff]
  %v5567 = vld [vmem:[%s3 + $0x5a8] sm:$0xf]
  %v5568 = vld [vmem:[%s3 + $0x5ac] sm:$0xff]
  %v5569 = vld [vmem:[%s3 + $0x5b4] sm:$0xf]
  %v5570 = vld [vmem:[%s3 + $0x5b8] sm:$0xff]
  %v5571 = vld [vmem:[%s3 + $0x5c0] sm:$0xf]
  %v5572 = vld [vmem:[%s3 + $0x5c4] sm:$0xff]
  %v5573 = vld [vmem:[%s3 + $0x5cc] sm:$0xf]
  %v5574 = vld [vmem:[%s3 + $0x5d0] sm:$0xff]
  %v5575 = vld [vmem:[%s3 + $0x5d8] sm:$0xf]
  %v5576 = vld [vmem:[%s3 + $0x5dc] sm:$0xff]
  %v5577 = vld [vmem:[%s3 + $0x5e4] sm:$0xf]
  %v5578 = vld [vmem:[%s3 + $0x5e8] sm:$0xff]
  %v5579 = vld [vmem:[%s3 + $0x5f0] sm:$0xf]
  %v5580 = vld [vmem:[%s3 + $0x5f4] sm:$0xff]
  %v5581 = vld [vmem:[%s3 + $0x5fc] sm:$0xf]
  %v5582 = vld [vmem:[%s3 + $0x600] sm:$0xff]
  %v5583 = vld [vmem:[%s3 + $0x608] sm:$0xf]
  %v5584 = vld [vmem:[%s3 + $0x60c] sm:$0xff]
  %v5585 = vld [vmem:[%s3 + $0x614] sm:$0xf]
  %v5586 = vld [vmem:[%s3 + $0x618] sm:$0xff]
  %v5587 = vld [vmem:[%s3 + $0x620] sm:$0xf]
  %v5588 = vld [vmem:[%s3 + $0x624] sm:$0xff]
  %v5589 = vld [vmem:[%s3 + $0x62c] sm:$0xf]
  %v5590 = vld [vmem:[%s3 + $0x630] sm:$0xff]
  %v5591 = vld [vmem:[%s3 + $0x638] sm:$0xf]
  %v5592 = vld [vmem:[%s3 + $0x63c] sm:$0xff]
  %v5593 = vld [vmem:[%s3 + $0x644] sm:$0xf]
  %v5594 = vld [vmem:[%s3 + $0x648] sm:$0xff]
  %v5595 = vld [vmem:[%s3 + $0x650] sm:$0xf]
  %v5596 = vld [vmem:[%s3 + $0x654] sm:$0xff]
  %v5597 = vld [vmem:[%s3 + $0x65c] sm:$0xf]
  %v5598 = vld [vmem:[%s3 + $0x660] sm:$0xff]
  %v5599 = vld [vmem:[%s3 + $0x668] sm:$0xf]
  %v5600 = vld [vmem:[%s3 + $0x66c] sm:$0xff]
  %v5601 = vld [vmem:[%s3 + $0x674] sm:$0xf]
  %v5602 = vld [vmem:[%s3 + $0x678] sm:$0xff]
  %v5603 = vld [vmem:[%s3 + $0x680] sm:$0xf]
  %v5604 = vld [vmem:[%s3 + $0x684] sm:$0xff]
  %v5605 = vld [vmem:[%s3 + $0x68c] sm:$0xf]
  %v5606 = vld [vmem:[%s3 + $0x690] sm:$0xff]
  %v5607 = vld [vmem:[%s3 + $0x698] sm:$0xf]
  %v5608 = vld [vmem:[%s3 + $0x69c] sm:$0xff]
  %v5609 = vld [vmem:[%s3 + $0x6a4] sm:$0xf]
  %v5610 = vld [vmem:[%s3 + $0x6a8] sm:$0xff]
  %v5611 = vld [vmem:[%s3 + $0x6b0] sm:$0xf]
  %v5612 = vld [vmem:[%s3 + $0x6b4] sm:$0xff]
  %v5613 = vld [vmem:[%s3 + $0x6bc] sm:$0xf]
  %v5614 = vld [vmem:[%s3 + $0x6c0] sm:$0xff]
  %v5615 = vld [vmem:[%s3 + $0x6c8] sm:$0xf]
  %v5616 = vld [vmem:[%s3 + $0x6cc] sm:$0xff]
  %v5617 = vld [vmem:[%s3 + $0x6d4] sm:$0xf]
  %v5618 = vld [vmem:[%s3 + $0x6d8] sm:$0xff]
  %v5619 = vld [vmem:[%s3 + $0x6e0] sm:$0xf]
  %v5620 = vld [vmem:[%s3 + $0x6e4] sm:$0xff]
  %v5621 = vld [vmem:[%s3 + $0x6ec] sm:$0xf]
  %v5622 = vld [vmem:[%s3 + $0x6f0] sm:$0xff]
  %v5623 = vld [vmem:[%s3 + $0x6f8] sm:$0xf]
  %v5624 = vld [vmem:[%s3 + $0x6fc] sm:$0xff]
  %v5625 = vld [vmem:[%s3 + $0x704] sm:$0xf]
  %v5626 = vld [vmem:[%s3 + $0x708] sm:$0xff]
  %v5627 = vld [vmem:[%s3 + $0x710] sm:$0xf]
  %v5628 = vld [vmem:[%s3 + $0x714] sm:$0xff]
  %v5629 = vld [vmem:[%s3 + $0x71c] sm:$0xf]
  %v5630 = vld [vmem:[%s3 + $0x720] sm:$0xff]
  %v5631 = vld [vmem:[%s3 + $0x728] sm:$0xf]
  %v5632 = vld [vmem:[%s3 + $0x72c] sm:$0xff]
  %v5633 = vld [vmem:[%s3 + $0x734] sm:$0xf]
  %v5634 = vld [vmem:[%s3 + $0x738] sm:$0xff]
  %v5635 = vld [vmem:[%s3 + $0x740] sm:$0xf]
  %v5636 = vld [vmem:[%s3 + $0x744] sm:$0xff]
  %v5637 = vld [vmem:[%s3 + $0x74c] sm:$0xf]
  %v5638 = vld [vmem:[%s3 + $0x750] sm:$0xff]
  %v5639 = vld [vmem:[%s3 + $0x758] sm:$0xf]
  %v5640 = vld [vmem:[%s3 + $0x75c] sm:$0xff]
  %v5641 = vld [vmem:[%s3 + $0x764] sm:$0xf]
  %v5642 = vld [vmem:[%s3 + $0x768] sm:$0xff]
  %v5643 = vld [vmem:[%s3 + $0x770] sm:$0xf]
  %v5644 = vld [vmem:[%s3 + $0x774] sm:$0xff]
  %v5645 = vld [vmem:[%s3 + $0x77c] sm:$0xf]
  %v5646 = vld [vmem:[%s3 + $0x780] sm:$0xff]
  %v5647 = vld [vmem:[%s3 + $0x788] sm:$0xf]
  %v5648 = vld [vmem:[%s3 + $0x78c] sm:$0xff]
  %v5649 = vld [vmem:[%s3 + $0x794] sm:$0xf]
  %v5650 = vld [vmem:[%s3 + $0x798] sm:$0xff]
  %v5651 = vld [vmem:[%s3 + $0x7a0] sm:$0xf]
  %v5652 = vld [vmem:[%s3 + $0x7a4] sm:$0xff]
  %v5653 = vld [vmem:[%s3 + $0x7ac] sm:$0xf]
  %v5654 = vld [vmem:[%s3 + $0x7b0] sm:$0xff]
  %v5655 = vld [vmem:[%s3 + $0x7b8] sm:$0xf]
  %v5656 = vld [vmem:[%s3 + $0x7bc] sm:$0xff]
  %v5657 = vld [vmem:[%s3 + $0x7c4] sm:$0xf]
  %v5658 = vld [vmem:[%s3 + $0x7c8] sm:$0xff]
  %v5659 = vld [vmem:[%s3 + $0x7d0] sm:$0xf]
  %v5660 = vld [vmem:[%s3 + $0x7d4] sm:$0xff]
  %v5661 = vld [vmem:[%s3 + $0x7dc] sm:$0xf]
  %v5662 = vld [vmem:[%s3 + $0x7e0] sm:$0xff]
  %v5663 = vld [vmem:[%s3 + $0x7e8] sm:$0xf]
  %v5664 = vld [vmem:[%s3 + $0x7ec] sm:$0xff]
  %v5665 = vld [vmem:[%s3 + $0x7f4] sm:$0xf]
  %v5666 = vld [vmem:[%s3 + $0x7f8] sm:$0xff]
  %v5667 = vld [vmem:[%s3 + $0x800] sm:$0xf]
  %v5668 = vld [vmem:[%s3 + $0x804] sm:$0xff]
  %v5669 = vld [vmem:[%s3 + $0x80c] sm:$0xf]
  %v5670 = vld [vmem:[%s3 + $0x810] sm:$0xff]
  %v5671 = vld [vmem:[%s3 + $0x818] sm:$0xf]
  %v5672 = vld [vmem:[%s3 + $0x81c] sm:$0xff]
  %v5673 = vld [vmem:[%s3 + $0x824] sm:$0xf]
  %v5674 = vld [vmem:[%s3 + $0x828] sm:$0xff]
  %v5675 = vld [vmem:[%s3 + $0x830] sm:$0xf]
  %v5676 = vld [vmem:[%s3 + $0x834] sm:$0xff]
  %v5677 = vld [vmem:[%s3 + $0x83c] sm:$0xf]
  %v5678 = vld [vmem:[%s3 + $0x840] sm:$0xff]
  %v5679 = vld [vmem:[%s3 + $0x848] sm:$0xf]
  %v5680 = vld [vmem:[%s3 + $0x84c] sm:$0xff]
  %v5681 = vld [vmem:[%s3 + $0x854] sm:$0xf]
  %v5682 = vld [vmem:[%s3 + $0x858] sm:$0xff]
  %v5683 = vld [vmem:[%s3 + $0x860] sm:$0xf]
  %v5684 = vld [vmem:[%s3 + $0x864] sm:$0xff]
  %v5685 = vld [vmem:[%s3 + $0x86c] sm:$0xf]
  %v5686 = vld [vmem:[%s3 + $0x870] sm:$0xff]
  %v5687 = vld [vmem:[%s3 + $0x878] sm:$0xf]
  %v5688 = vld [vmem:[%s3 + $0x87c] sm:$0xff]
  %v5689 = vld [vmem:[%s3 + $0x884] sm:$0xf]
  %v5690 = vld [vmem:[%s3 + $0x888] sm:$0xff]
  %v5691 = vld [vmem:[%s3 + $0x890] sm:$0xf]
  %v5692 = vld [vmem:[%s3 + $0x894] sm:$0xff]
  %v5693 = vld [vmem:[%s3 + $0x89c] sm:$0xf]
  %v5694 = vld [vmem:[%s3 + $0x8a0] sm:$0xff]
  %v5695 = vld [vmem:[%s3 + $0x8a8] sm:$0xf]
  %v5696 = vld [vmem:[%s3 + $0x8ac] sm:$0xff]
  %v5697 = vld [vmem:[%s3 + $0x8b4] sm:$0xf]
  %v5698 = vld [vmem:[%s3 + $0x8b8] sm:$0xff]
  %v5699 = vld [vmem:[%s3 + $0x8c0] sm:$0xf]
  %v5700 = vld [vmem:[%s3 + $0x8c4] sm:$0xff]
  %v5701 = vld [vmem:[%s3 + $0x8cc] sm:$0xf]
  %v5702 = vld [vmem:[%s3 + $0x8d0] sm:$0xff]
  %v5703 = vld [vmem:[%s3 + $0x8d8] sm:$0xf]
  %v5704 = vld [vmem:[%s3 + $0x8dc] sm:$0xff]
  %v5705 = vld [vmem:[%s3 + $0x8e4] sm:$0xf]
  %v5706 = vld [vmem:[%s3 + $0x8e8] sm:$0xff]
  %v5707 = vld [vmem:[%s3 + $0x8f0] sm:$0xf]
  %v5708 = vld [vmem:[%s3 + $0x8f4] sm:$0xff]
  %v5709 = vld [vmem:[%s3 + $0x8fc] sm:$0xf]
  %v5710 = vld [vmem:[%s3 + $0x900] sm:$0xff]
  %v5711 = vld [vmem:[%s3 + $0x908] sm:$0xf]
  %v5712 = vld [vmem:[%s3 + $0x90c] sm:$0xff]
  %v5713 = vld [vmem:[%s3 + $0x914] sm:$0xf]
  %v5714 = vld [vmem:[%s3 + $0x918] sm:$0xff]
  %v5715 = vld [vmem:[%s3 + $0x920] sm:$0xf]
  %v5716 = vld [vmem:[%s3 + $0x924] sm:$0xff]
  %v5717 = vld [vmem:[%s3 + $0x92c] sm:$0xf]
  %v5718 = vld [vmem:[%s3 + $0x930] sm:$0xff]
  %v5719 = vld [vmem:[%s3 + $0x938] sm:$0xf]
  %v5720 = vld [vmem:[%s3 + $0x93c] sm:$0xff]
  %v5721 = vld [vmem:[%s3 + $0x944] sm:$0xf]
  %v5722 = vld [vmem:[%s3 + $0x948] sm:$0xff]
  %v5723 = vld [vmem:[%s3 + $0x950] sm:$0xf]
  %v5724 = vld [vmem:[%s3 + $0x954] sm:$0xff]
  %v5725 = vld [vmem:[%s3 + $0x95c] sm:$0xf]
  %v5726 = vld [vmem:[%s3 + $0x960] sm:$0xff]
  %v5727 = vld [vmem:[%s3 + $0x968] sm:$0xf]
  %v5728 = vld [vmem:[%s3 + $0x96c] sm:$0xff]
  %v5729 = vld [vmem:[%s3 + $0x974] sm:$0xf]
  %v5730 = vld [vmem:[%s3 + $0x978] sm:$0xff]
  %v5731 = vld [vmem:[%s3 + $0x980] sm:$0xf]
  %v5732 = vld [vmem:[%s3 + $0x984] sm:$0xff]
  %v5733 = vld [vmem:[%s3 + $0x98c] sm:$0xf]
  %v5734 = vld [vmem:[%s3 + $0x990] sm:$0xff]
  %v5735 = vld [vmem:[%s3 + $0x998] sm:$0xf]
  %v5736 = vld [vmem:[%s3 + $0x99c] sm:$0xff]
  %v5737 = vld [vmem:[%s3 + $0x9a4] sm:$0xf]
  %v5738 = vld [vmem:[%s3 + $0x9a8] sm:$0xff]
  %v5739 = vld [vmem:[%s3 + $0x9b0] sm:$0xf]
  %v5740 = vld [vmem:[%s3 + $0x9b4] sm:$0xff]
  %v5741 = vld [vmem:[%s3 + $0x9bc] sm:$0xf]
  %v5742 = vld [vmem:[%s3 + $0x9c0] sm:$0xff]
  %v5743 = vld [vmem:[%s3 + $0x9c8] sm:$0xf]
  %v5744 = vld [vmem:[%s3 + $0x9cc] sm:$0xff]
  %v5745 = vld [vmem:[%s3 + $0x9d4] sm:$0xf]
  %v5746 = vld [vmem:[%s3 + $0x9d8] sm:$0xff]
  %v5747 = vld [vmem:[%s3 + $0x9e0] sm:$0xf]
  %v5748 = vld [vmem:[%s3 + $0x9e4] sm:$0xff]
  %v5749 = vld [vmem:[%s3 + $0x9ec] sm:$0xf]
  %v5750 = vld [vmem:[%s3 + $0x9f0] sm:$0xff]
  %v5751 = vld [vmem:[%s3 + $0x9f8] sm:$0xf]
  %v5752 = vld [vmem:[%s3 + $0x9fc] sm:$0xff]
  %v5753 = vld [vmem:[%s3 + $0xa04] sm:$0xf]
  %v5754 = vld [vmem:[%s3 + $0xa08] sm:$0xff]
  %v5755 = vld [vmem:[%s3 + $0xa10] sm:$0xf]
  %v5756 = vld [vmem:[%s3 + $0xa14] sm:$0xff]
  %v5757 = vld [vmem:[%s3 + $0xa1c] sm:$0xf]
  %v5758 = vld [vmem:[%s3 + $0xa20] sm:$0xff]
  %v5759 = vld [vmem:[%s3 + $0xa28] sm:$0xf]
  %v5760 = vld [vmem:[%s3 + $0xa2c] sm:$0xff]
  %v5761 = vld [vmem:[%s3 + $0xa34] sm:$0xf]
  %v5762 = vld [vmem:[%s3 + $0xa38] sm:$0xff]
  %v5763 = vld [vmem:[%s3 + $0xa40] sm:$0xf]
  %v5764 = vld [vmem:[%s3 + $0xa44] sm:$0xff]
  %v5765 = vld [vmem:[%s3 + $0xa4c] sm:$0xf]
  %v5766 = vld [vmem:[%s3 + $0xa50] sm:$0xff]
  %v5767 = vld [vmem:[%s3 + $0xa58] sm:$0xf]
  %v5768 = vld [vmem:[%s3 + $0xa5c] sm:$0xff]
  %v5769 = vld [vmem:[%s3 + $0xa64] sm:$0xf]
  %v5770 = vld [vmem:[%s3 + $0xa68] sm:$0xff]
  %v5771 = vld [vmem:[%s3 + $0xa70] sm:$0xf]
  %v5772 = vld [vmem:[%s3 + $0xa74] sm:$0xff]
  %v5773 = vld [vmem:[%s3 + $0xa7c] sm:$0xf]
  %v5774 = vld [vmem:[%s3 + $0xa80] sm:$0xff]
  %v5775 = vld [vmem:[%s3 + $0xa88] sm:$0xf]
  %v5776 = vld [vmem:[%s3 + $0xa8c] sm:$0xff]
  %v5777 = vld [vmem:[%s3 + $0xa94] sm:$0xf]
  %v5778 = vld [vmem:[%s3 + $0xa98] sm:$0xff]
  %v5779 = vld [vmem:[%s3 + $0xaa0] sm:$0xf]
  %v5780 = vld [vmem:[%s3 + $0xaa4] sm:$0xff]
  %v5781 = vld [vmem:[%s3 + $0xaac] sm:$0xf]
  %v5782 = vld [vmem:[%s3 + $0xab0] sm:$0xff]
  %v5783 = vld [vmem:[%s3 + $0xab8] sm:$0xf]
  %v5784 = vld [vmem:[%s3 + $0xabc] sm:$0xff]
  %v5785 = vld [vmem:[%s3 + $0xac4] sm:$0xf]
  %v5786 = vld [vmem:[%s3 + $0xac8] sm:$0xff]
  %v5787 = vld [vmem:[%s3 + $0xad0] sm:$0xf]
  %v5788 = vld [vmem:[%s3 + $0xad4] sm:$0xff]
  %v5789 = vld [vmem:[%s3 + $0xadc] sm:$0xf]
  %v5790 = vld [vmem:[%s3 + $0xae0] sm:$0xff]
  %v5791 = vld [vmem:[%s3 + $0xae8] sm:$0xf]
  %v5792 = vld [vmem:[%s3 + $0xaec] sm:$0xff]
  %v5793 = vld [vmem:[%s3 + $0xaf4] sm:$0xf]
  %v5794 = vld [vmem:[%s3 + $0xaf8] sm:$0xff]
  %v5795 = vld [vmem:[%s3 + $0xb00] sm:$0xf]
  %v5796 = vld [vmem:[%s3 + $0xb04] sm:$0xff]
  %v5797 = vld [vmem:[%s3 + $0xb0c] sm:$0xf]
  %v5798 = vld [vmem:[%s3 + $0xb10] sm:$0xff]
  %v5799 = vld [vmem:[%s3 + $0xb18] sm:$0xf]
  %v5800 = vld [vmem:[%s3 + $0xb1c] sm:$0xff]
  %v5801 = vld [vmem:[%s3 + $0xb24] sm:$0xf]
  %v5802 = vld [vmem:[%s3 + $0xb28] sm:$0xff]
  %v5803 = vld [vmem:[%s3 + $0xb30] sm:$0xf]
  %v5804 = vld [vmem:[%s3 + $0xb34] sm:$0xff]
  %v5805 = vld [vmem:[%s3 + $0xb3c] sm:$0xf]
  %v5806 = vld [vmem:[%s3 + $0xb40] sm:$0xff]
  %v5807 = vld [vmem:[%s3 + $0xb48] sm:$0xf]
  %v5808 = vld [vmem:[%s3 + $0xb4c] sm:$0xff]
  %v5809 = vld [vmem:[%s3 + $0xb54] sm:$0xf]
  %v5810 = vld [vmem:[%s3 + $0xb58] sm:$0xff]
  %v5811 = vld [vmem:[%s3 + $0xb60] sm:$0xf]
  %v5812 = vld [vmem:[%s3 + $0xb64] sm:$0xff]
  %v5813 = vld [vmem:[%s3 + $0xb6c] sm:$0xf]
  %v5814 = vld [vmem:[%s3 + $0xb70] sm:$0xff]
  %v5815 = vld [vmem:[%s3 + $0xb78] sm:$0xf]
  %v5816 = vld [vmem:[%s3 + $0xb7c] sm:$0xff]
  %v5817 = vld [vmem:[%s3 + $0xb84] sm:$0xf]
  %v5818 = vld [vmem:[%s3 + $0xb88] sm:$0xff]
  %v5819 = vld [vmem:[%s3 + $0xb90] sm:$0xf]
  %v5820 = vld [vmem:[%s3 + $0xb94] sm:$0xff]
  %v5821 = vld [vmem:[%s3 + $0xb9c] sm:$0xf]
  %v5822 = vld [vmem:[%s3 + $0xba0] sm:$0xff]
  %v5823 = vld [vmem:[%s3 + $0xba8] sm:$0xf]
  %v5824 = vld [vmem:[%s3 + $0xbac] sm:$0xff]
  %v5825 = vld [vmem:[%s3 + $0xbb4] sm:$0xf]
  %v5826 = vld [vmem:[%s3 + $0xbb8] sm:$0xff]
  %v5827 = vld [vmem:[%s3 + $0xbc0] sm:$0xf]
  %v5828 = vld [vmem:[%s3 + $0xbc4] sm:$0xff]
  %v5829 = vld [vmem:[%s3 + $0xbcc] sm:$0xf]
  %v5830 = vld [vmem:[%s3 + $0xbd0] sm:$0xff]
  %v5831 = vld [vmem:[%s3 + $0xbd8] sm:$0xf]
  %v5832 = vld [vmem:[%s3 + $0xbdc] sm:$0xff]
  %v5833 = vld [vmem:[%s3 + $0xbe4] sm:$0xf]
  %v5834 = vld [vmem:[%s3 + $0xbe8] sm:$0xff]
  %v5835 = vld [vmem:[%s3 + $0xbf0] sm:$0xf]
  %v5836 = vld [vmem:[%s3 + $0xbf4] sm:$0xff]
  %v5837 = vld [vmem:[%s3 + $0xbfc] sm:$0xf]
  %v5838 = vld [vmem:[%s3 + $0xc00] sm:$0xff]
  %v5839 = vld [vmem:[%s3 + $0xc08] sm:$0xf]
  %v5840 = vld [vmem:[%s3 + $0xc0c] sm:$0xff]
  %v5841 = vld [vmem:[%s3 + $0xc14] sm:$0xf]
  %v5842 = vld [vmem:[%s3 + $0xc18] sm:$0xff]
  %v5843 = vld [vmem:[%s3 + $0xc20] sm:$0xf]
  %v5844 = vld [vmem:[%s3 + $0xc24] sm:$0xff]
  %v5845 = vld [vmem:[%s3 + $0xc2c] sm:$0xf]
  %v5846 = vld [vmem:[%s3 + $0xc30] sm:$0xff]
  %v5847 = vld [vmem:[%s3 + $0xc38] sm:$0xf]
  %v5848 = vld [vmem:[%s3 + $0xc3c] sm:$0xff]
  %v5849 = vld [vmem:[%s3 + $0xc44] sm:$0xf]
  %v5850 = vld [vmem:[%s3 + $0xc48] sm:$0xff]
  %v5851 = vld [vmem:[%s3 + $0xc50] sm:$0xf]
  %v5852 = vld [vmem:[%s3 + $0xc54] sm:$0xff]
  %v5853 = vld [vmem:[%s3 + $0xc5c] sm:$0xf]
  %v5854 = vld [vmem:[%s3 + $0xc60] sm:$0xff]
  %v5855 = vld [vmem:[%s3 + $0xc68] sm:$0xf]
  %v5856 = vld [vmem:[%s3 + $0xc6c] sm:$0xff]
  %v5857 = vld [vmem:[%s3 + $0xc74] sm:$0xf]
  %v5858 = vld [vmem:[%s3 + $0xc78] sm:$0xff]
  %v5859 = vld [vmem:[%s3 + $0xc80] sm:$0xf]
  %v5860 = vld [vmem:[%s3 + $0xc84] sm:$0xff]
  %v5861 = vld [vmem:[%s3 + $0xc8c] sm:$0xf]
  %v5862 = vld [vmem:[%s3 + $0xc90] sm:$0xff]
  %v5863 = vld [vmem:[%s3 + $0xc98] sm:$0xf]
  %v5864 = vld [vmem:[%s3 + $0xc9c] sm:$0xff]
  %v5865 = vld [vmem:[%s3 + $0xca4] sm:$0xf]
  %v5866 = vld [vmem:[%s3 + $0xca8] sm:$0xff]
  %v5867 = vld [vmem:[%s3 + $0xcb0] sm:$0xf]
  %v5868 = vld [vmem:[%s3 + $0xcb4] sm:$0xff]
  %v5869 = vld [vmem:[%s3 + $0xcbc] sm:$0xf]
  %v5870 = vld [vmem:[%s3 + $0xcc0] sm:$0xff]
  %v5871 = vld [vmem:[%s3 + $0xcc8] sm:$0xf]
  %v5872 = vld [vmem:[%s3 + $0xccc] sm:$0xff]
  %v5873 = vld [vmem:[%s3 + $0xcd4] sm:$0xf]
  %v5874 = vld [vmem:[%s3 + $0xcd8] sm:$0xff]
  %v5875 = vld [vmem:[%s3 + $0xce0] sm:$0xf]
  %v5876 = vld [vmem:[%s3 + $0xce4] sm:$0xff]
  %v5877 = vld [vmem:[%s3 + $0xcec] sm:$0xf]
  %v5878 = vld [vmem:[%s3 + $0xcf0] sm:$0xff]
  %v5879 = vld [vmem:[%s3 + $0xcf8] sm:$0xf]
  %v5880 = vld [vmem:[%s3 + $0xcfc] sm:$0xff]
  %v5881 = vld [vmem:[%s3 + $0xd04] sm:$0xf]
  %v5882 = vld [vmem:[%s3 + $0xd08] sm:$0xff]
  %v5883 = vld [vmem:[%s3 + $0xd10] sm:$0xf]
  %v5884 = vld [vmem:[%s3 + $0xd14] sm:$0xff]
  %v5885 = vld [vmem:[%s3 + $0xd1c] sm:$0xf]
  %v5886 = vld [vmem:[%s3 + $0xd20] sm:$0xff]
  %v5887 = vld [vmem:[%s3 + $0xd28] sm:$0xf]
  %v5888 = vld [vmem:[%s3 + $0xd2c] sm:$0xff]
  %v5889 = vld [vmem:[%s3 + $0xd34] sm:$0xf]
  %v5890 = vld [vmem:[%s3 + $0xd38] sm:$0xff]
  %v5891 = vld [vmem:[%s3 + $0xd40] sm:$0xf]
  %v5892 = vld [vmem:[%s3 + $0xd44] sm:$0xff]
  %v5893 = vld [vmem:[%s3 + $0xd4c] sm:$0xf]
  %v5894 = vld [vmem:[%s3 + $0xd50] sm:$0xff]
  %v5895 = vld [vmem:[%s3 + $0xd58] sm:$0xf]
  %v5896 = vld [vmem:[%s3 + $0xd5c] sm:$0xff]
  %v5897 = vld [vmem:[%s3 + $0xd64] sm:$0xf]
  %v5898 = vld [vmem:[%s3 + $0xd68] sm:$0xff]
  %v5899 = vld [vmem:[%s3 + $0xd70] sm:$0xf]
  %v5900 = vld [vmem:[%s3 + $0xd74] sm:$0xff]
  %v5901 = vld [vmem:[%s3 + $0xd7c] sm:$0xf]
  %v5938 = vunpack.c.l.b16 %v5290
  %v5939 = vunpack.c.h.b16 %v5290
  %v5940 = vunpack.c.l.b16 %v5291
  %v5941 = vunpack.c.h.b16 %v5291
  %v5942 = vunpack.c.l.b16 %v5292
  %v5943 = vunpack.c.h.b16 %v5292
  %v5944 = vunpack.c.l.b16 %v5293
  %v5945 = vunpack.c.h.b16 %v5293
  %v5946 = vunpack.c.l.b16 %v5294
  %v5947 = vunpack.c.h.b16 %v5294
  %v5948 = vunpack.c.l.b16 %v5295
  %v5949 = vunpack.c.h.b16 %v5295
  %v5950 = vunpack.c.l.b16 %v5296
  %v5951 = vunpack.c.h.b16 %v5296
  %v5952 = vunpack.c.l.b16 %v5297
  %v5953 = vunpack.c.h.b16 %v5297
  %v5954 = vunpack.c.l.b16 %v5298
  %v5955 = vunpack.c.h.b16 %v5298
  %v5956 = vunpack.c.l.b16 %v5299
  %v5957 = vunpack.c.h.b16 %v5299
  %v5958 = vunpack.c.l.b16 %v5300
  %v5959 = vunpack.c.h.b16 %v5300
  %v5960 = vunpack.c.l.b16 %v5301
  %v5961 = vunpack.c.h.b16 %v5301
  %v5962 = vunpack.c.l.b16 %v5302
  %v5963 = vunpack.c.h.b16 %v5302
  %v5964 = vunpack.c.l.b16 %v5303
  %v5965 = vunpack.c.h.b16 %v5303
  %v5966 = vunpack.c.l.b16 %v5304
  %v5967 = vunpack.c.h.b16 %v5304
  %v5968 = vunpack.c.l.b16 %v5305
  %v5969 = vunpack.c.h.b16 %v5305
  %v5970 = vunpack.c.l.b16 %v5306
  %v5971 = vunpack.c.h.b16 %v5306
  %v5972 = vunpack.c.l.b16 %v5307
  %v5973 = vunpack.c.h.b16 %v5307
  %v5974 = vunpack.c.l.b16 %v5308
  %v5975 = vunpack.c.h.b16 %v5308
  %v5976 = vunpack.c.l.b16 %v5309
  %v5977 = vunpack.c.h.b16 %v5309
  %v5978 = vunpack.c.l.b16 %v5310
  %v5979 = vunpack.c.h.b16 %v5310
  %v5980 = vunpack.c.l.b16 %v5311
  %v5981 = vunpack.c.h.b16 %v5311
  %v5982 = vunpack.c.l.b16 %v5312
  %v5983 = vunpack.c.h.b16 %v5312
  %v5984 = vunpack.c.l.b16 %v5313
  %v5985 = vunpack.c.h.b16 %v5313
  %v5986 = vunpack.c.l.b16 %v5314
  %v5987 = vunpack.c.h.b16 %v5314
  %v5988 = vunpack.c.l.b16 %v5315
  %v5989 = vunpack.c.h.b16 %v5315
  %v5990 = vunpack.c.l.b16 %v5316
  %v5991 = vunpack.c.h.b16 %v5316
  %v5992 = vunpack.c.l.b16 %v5317
  %v5993 = vunpack.c.h.b16 %v5317
  %v5994 = vunpack.c.l.b16 %v5318
  %v5995 = vunpack.c.h.b16 %v5318
  %v5996 = vunpack.c.l.b16 %v5319
  %v5997 = vunpack.c.h.b16 %v5319
  %v5998 = vunpack.c.l.b16 %v5320
  %v5999 = vunpack.c.h.b16 %v5320
  %v6000 = vunpack.c.l.b16 %v5321
  %v6001 = vunpack.c.h.b16 %v5321
  %v6002 = vunpack.c.l.b16 %v5322
  %v6003 = vunpack.c.h.b16 %v5322
  %v6004 = vunpack.c.l.b16 %v5323
  %v6005 = vunpack.c.h.b16 %v5323
  %v6006 = vunpack.c.l.b16 %v5324
  %v6007 = vunpack.c.h.b16 %v5324
  %v6008 = vunpack.c.l.b16 %v5325
  %v6009 = vunpack.c.h.b16 %v5325
  %v6010 = vpack.c.b16 %v5956, %v5938
  %v6011 = vpack.c.b16 %v5957, %v5939
  %v6012 = vpack.c.b16 %v5958, %v5940
  %v6013 = vpack.c.b16 %v5959, %v5941
  %v6014 = vpack.c.b16 %v5960, %v5942
  %v6015 = vpack.c.b16 %v5961, %v5943
  %v6016 = vpack.c.b16 %v5962, %v5944
  %v6017 = vpack.c.b16 %v5963, %v5945
  %v6018 = vpack.c.b16 %v5964, %v5946
  %v6019 = vpack.c.b16 %v5965, %v5947
  %v6020 = vpack.c.b16 %v5966, %v5948
  %v6021 = vpack.c.b16 %v5967, %v5949
  %v6022 = vpack.c.b16 %v5968, %v5950
  %v6023 = vpack.c.b16 %v5969, %v5951
  %v6024 = vpack.c.b16 %v5970, %v5952
  %v6025 = vpack.c.b16 %v5971, %v5953
  %v6026 = vpack.c.b16 %v5972, %v5954
  %v6027 = vpack.c.b16 %v5973, %v5955
  %v6028 = vpack.c.b16 %v5992, %v5974
  %v6029 = vpack.c.b16 %v5993, %v5975
  %v6030 = vpack.c.b16 %v5994, %v5976
  %v6031 = vpack.c.b16 %v5995, %v5977
  %v6032 = vpack.c.b16 %v5996, %v5978
  %v6033 = vpack.c.b16 %v5997, %v5979
  %v6034 = vpack.c.b16 %v5998, %v5980
  %v6035 = vpack.c.b16 %v5999, %v5981
  %v6036 = vpack.c.b16 %v6000, %v5982
  %v6037 = vpack.c.b16 %v6001, %v5983
  %v6038 = vpack.c.b16 %v6002, %v5984
  %v6039 = vpack.c.b16 %v6003, %v5985
  %v6040 = vpack.c.b16 %v6004, %v5986
  %v6041 = vpack.c.b16 %v6005, %v5987
  %v6042 = vpack.c.b16 %v6006, %v5988
  %v6043 = vpack.c.b16 %v6007, %v5989
  %v6044 = vpack.c.b16 %v6008, %v5990
  %v6045 = vpack.c.b16 %v6009, %v5991
  %v6658 = vunpack.c.l.b16 %v5326
  %v6659 = vunpack.c.h.b16 %v5326
  %v6660 = vunpack.c.l.b16 %v5327
  %v6661 = vunpack.c.l.b16 %v5328
  %v6662 = vunpack.c.h.b16 %v5328
  %v6663 = vunpack.c.l.b16 %v5329
  %v6664 = vunpack.c.l.b16 %v5330
  %v6665 = vunpack.c.h.b16 %v5330
  %v6666 = vunpack.c.l.b16 %v5331
  %v6667 = vunpack.c.l.b16 %v5332
  %v6668 = vunpack.c.h.b16 %v5332
  %v6669 = vunpack.c.l.b16 %v5333
  %v6670 = vunpack.c.l.b16 %v5334
  %v6671 = vunpack.c.h.b16 %v5334
  %v6672 = vunpack.c.l.b16 %v5335
  %v6673 = vunpack.c.l.b16 %v5336
  %v6674 = vunpack.c.h.b16 %v5336
  %v6675 = vunpack.c.l.b16 %v5337
  %v6676 = vunpack.c.l.b16 %v5338
  %v6677 = vunpack.c.h.b16 %v5338
  %v6678 = vunpack.c.l.b16 %v5339
  %v6679 = vunpack.c.l.b16 %v5340
  %v6680 = vunpack.c.h.b16 %v5340
  %v6681 = vunpack.c.l.b16 %v5341
  %v6682 = vunpack.c.l.b16 %v5342
  %v6683 = vunpack.c.h.b16 %v5342
  %v6684 = vunpack.c.l.b16 %v5343
  %v6685 = vunpack.c.l.b16 %v5344
  %v6686 = vunpack.c.h.b16 %v5344
  %v6687 = vunpack.c.l.b16 %v5345
  %v6688 = vunpack.c.l.b16 %v5346
  %v6689 = vunpack.c.h.b16 %v5346
  %v6690 = vunpack.c.l.b16 %v5347
  %v6691 = vunpack.c.l.b16 %v5348
  %v6692 = vunpack.c.h.b16 %v5348
  %v6693 = vunpack.c.l.b16 %v5349
  %v6694 = vunpack.c.l.b16 %v5350
  %v6695 = vunpack.c.h.b16 %v5350
  %v6696 = vunpack.c.l.b16 %v5351
  %v6697 = vunpack.c.l.b16 %v5352
  %v6698 = vunpack.c.h.b16 %v5352
  %v6699 = vunpack.c.l.b16 %v5353
  %v6700 = vunpack.c.l.b16 %v5354
  %v6701 = vunpack.c.h.b16 %v5354
  %v6702 = vunpack.c.l.b16 %v5355
  %v6703 = vunpack.c.l.b16 %v5356
  %v6704 = vunpack.c.h.b16 %v5356
  %v6705 = vunpack.c.l.b16 %v5357
  %v6706 = vunpack.c.l.b16 %v5358
  %v6707 = vunpack.c.h.b16 %v5358
  %v6708 = vunpack.c.l.b16 %v5359
  %v6709 = vunpack.c.l.b16 %v5360
  %v6710 = vunpack.c.h.b16 %v5360
  %v6711 = vunpack.c.l.b16 %v5361
  %v6712 = vunpack.c.l.b16 %v5362
  %v6713 = vunpack.c.h.b16 %v5362
  %v6714 = vunpack.c.l.b16 %v5363
  %v6715 = vunpack.c.l.b16 %v5364
  %v6716 = vunpack.c.h.b16 %v5364
  %v6717 = vunpack.c.l.b16 %v5365
  %v6718 = vunpack.c.l.b16 %v5366
  %v6719 = vunpack.c.h.b16 %v5366
  %v6720 = vunpack.c.l.b16 %v5367
  %v6721 = vunpack.c.l.b16 %v5368
  %v6722 = vunpack.c.h.b16 %v5368
  %v6723 = vunpack.c.l.b16 %v5369
  %v6724 = vunpack.c.l.b16 %v5370
  %v6725 = vunpack.c.h.b16 %v5370
  %v6726 = vunpack.c.l.b16 %v5371
  %v6727 = vunpack.c.l.b16 %v5372
  %v6728 = vunpack.c.h.b16 %v5372
  %v6729 = vunpack.c.l.b16 %v5373
  %v6730 = vunpack.c.l.b16 %v5374
  %v6731 = vunpack.c.h.b16 %v5374
  %v6732 = vunpack.c.l.b16 %v5375
  %v6733 = vunpack.c.l.b16 %v5376
  %v6734 = vunpack.c.h.b16 %v5376
  %v6735 = vunpack.c.l.b16 %v5377
  %v6736 = vunpack.c.l.b16 %v5378
  %v6737 = vunpack.c.h.b16 %v5378
  %v6738 = vunpack.c.l.b16 %v5379
  %v6739 = vunpack.c.l.b16 %v5380
  %v6740 = vunpack.c.h.b16 %v5380
  %v6741 = vunpack.c.l.b16 %v5381
  %v6742 = vunpack.c.l.b16 %v5382
  %v6743 = vunpack.c.h.b16 %v5382
  %v6744 = vunpack.c.l.b16 %v5383
  %v6745 = vunpack.c.l.b16 %v5384
  %v6746 = vunpack.c.h.b16 %v5384
  %v6747 = vunpack.c.l.b16 %v5385
  %v6748 = vunpack.c.l.b16 %v5386
  %v6749 = vunpack.c.h.b16 %v5386
  %v6750 = vunpack.c.l.b16 %v5387
  %v6751 = vunpack.c.l.b16 %v5388
  %v6752 = vunpack.c.h.b16 %v5388
  %v6753 = vunpack.c.l.b16 %v5389
  %v6754 = vunpack.c.l.b16 %v5390
  %v6755 = vunpack.c.h.b16 %v5390
  %v6756 = vunpack.c.l.b16 %v5391
  %v6757 = vunpack.c.l.b16 %v5392
  %v6758 = vunpack.c.h.b16 %v5392
  %v6759 = vunpack.c.l.b16 %v5393
  %v6760 = vunpack.c.l.b16 %v5394
  %v6761 = vunpack.c.h.b16 %v5394
  %v6762 = vunpack.c.l.b16 %v5395
  %v6763 = vunpack.c.l.b16 %v5396
  %v6764 = vunpack.c.h.b16 %v5396
  %v6765 = vunpack.c.l.b16 %v5397
  %v6766 = vunpack.c.l.b16 %v5398
  %v6767 = vunpack.c.h.b16 %v5398
  %v6768 = vunpack.c.l.b16 %v5399
  %v6769 = vunpack.c.l.b16 %v5400
  %v6770 = vunpack.c.h.b16 %v5400
  %v6771 = vunpack.c.l.b16 %v5401
  %v6772 = vunpack.c.l.b16 %v5402
  %v6773 = vunpack.c.h.b16 %v5402
  %v6774 = vunpack.c.l.b16 %v5403
  %v6775 = vunpack.c.l.b16 %v5404
  %v6776 = vunpack.c.h.b16 %v5404
  %v6777 = vunpack.c.l.b16 %v5405
  %v6778 = vunpack.c.l.b16 %v5406
  %v6779 = vunpack.c.h.b16 %v5406
  %v6780 = vunpack.c.l.b16 %v5407
  %v6781 = vunpack.c.l.b16 %v5408
  %v6782 = vunpack.c.h.b16 %v5408
  %v6783 = vunpack.c.l.b16 %v5409
  %v6784 = vunpack.c.l.b16 %v5410
  %v6785 = vunpack.c.h.b16 %v5410
  %v6786 = vunpack.c.l.b16 %v5411
  %v6787 = vunpack.c.l.b16 %v5412
  %v6788 = vunpack.c.h.b16 %v5412
  %v6789 = vunpack.c.l.b16 %v5413
  %v6790 = vunpack.c.l.b16 %v5414
  %v6791 = vunpack.c.h.b16 %v5414
  %v6792 = vunpack.c.l.b16 %v5415
  %v6793 = vunpack.c.l.b16 %v5416
  %v6794 = vunpack.c.h.b16 %v5416
  %v6795 = vunpack.c.l.b16 %v5417
  %v6796 = vunpack.c.l.b16 %v5418
  %v6797 = vunpack.c.h.b16 %v5418
  %v6798 = vunpack.c.l.b16 %v5419
  %v6799 = vunpack.c.l.b16 %v5420
  %v6800 = vunpack.c.h.b16 %v5420
  %v6801 = vunpack.c.l.b16 %v5421
  %v6802 = vunpack.c.l.b16 %v5422
  %v6803 = vunpack.c.h.b16 %v5422
  %v6804 = vunpack.c.l.b16 %v5423
  %v6805 = vunpack.c.l.b16 %v5424
  %v6806 = vunpack.c.h.b16 %v5424
  %v6807 = vunpack.c.l.b16 %v5425
  %v6808 = vunpack.c.l.b16 %v5426
  %v6809 = vunpack.c.h.b16 %v5426
  %v6810 = vunpack.c.l.b16 %v5427
  %v6811 = vunpack.c.l.b16 %v5428
  %v6812 = vunpack.c.h.b16 %v5428
  %v6813 = vunpack.c.l.b16 %v5429
  %v6814 = vunpack.c.l.b16 %v5430
  %v6815 = vunpack.c.h.b16 %v5430
  %v6816 = vunpack.c.l.b16 %v5431
  %v6817 = vunpack.c.l.b16 %v5432
  %v6818 = vunpack.c.h.b16 %v5432
  %v6819 = vunpack.c.l.b16 %v5433
  %v6820 = vunpack.c.l.b16 %v5434
  %v6821 = vunpack.c.h.b16 %v5434
  %v6822 = vunpack.c.l.b16 %v5435
  %v6823 = vunpack.c.l.b16 %v5436
  %v6824 = vunpack.c.h.b16 %v5436
  %v6825 = vunpack.c.l.b16 %v5437
  %v6826 = vunpack.c.l.b16 %v5438
  %v6827 = vunpack.c.h.b16 %v5438
  %v6828 = vunpack.c.l.b16 %v5439
  %v6829 = vunpack.c.l.b16 %v5440
  %v6830 = vunpack.c.h.b16 %v5440
  %v6831 = vunpack.c.l.b16 %v5441
  %v6832 = vunpack.c.l.b16 %v5442
  %v6833 = vunpack.c.h.b16 %v5442
  %v6834 = vunpack.c.l.b16 %v5443
  %v6835 = vunpack.c.l.b16 %v5444
  %v6836 = vunpack.c.h.b16 %v5444
  %v6837 = vunpack.c.l.b16 %v5445
  %v6838 = vunpack.c.l.b16 %v5446
  %v6839 = vunpack.c.h.b16 %v5446
  %v6840 = vunpack.c.l.b16 %v5447
  %v6841 = vunpack.c.l.b16 %v5448
  %v6842 = vunpack.c.h.b16 %v5448
  %v6843 = vunpack.c.l.b16 %v5449
  %v6844 = vunpack.c.l.b16 %v5450
  %v6845 = vunpack.c.h.b16 %v5450
  %v6846 = vunpack.c.l.b16 %v5451
  %v6847 = vunpack.c.l.b16 %v5452
  %v6848 = vunpack.c.h.b16 %v5452
  %v6849 = vunpack.c.l.b16 %v5453
  %v6850 = vunpack.c.l.b16 %v5454
  %v6851 = vunpack.c.h.b16 %v5454
  %v6852 = vunpack.c.l.b16 %v5455
  %v6853 = vunpack.c.l.b16 %v5456
  %v6854 = vunpack.c.h.b16 %v5456
  %v6855 = vunpack.c.l.b16 %v5457
  %v6856 = vunpack.c.l.b16 %v5458
  %v6857 = vunpack.c.h.b16 %v5458
  %v6858 = vunpack.c.l.b16 %v5459
  %v6859 = vunpack.c.l.b16 %v5460
  %v6860 = vunpack.c.h.b16 %v5460
  %v6861 = vunpack.c.l.b16 %v5461
  %v6862 = vunpack.c.l.b16 %v5462
  %v6863 = vunpack.c.h.b16 %v5462
  %v6864 = vunpack.c.l.b16 %v5463
  %v6865 = vunpack.c.l.b16 %v5464
  %v6866 = vunpack.c.h.b16 %v5464
  %v6867 = vunpack.c.l.b16 %v5465
  %v6868 = vunpack.c.l.b16 %v5466
  %v6869 = vunpack.c.h.b16 %v5466
  %v6870 = vunpack.c.l.b16 %v5467
  %v6871 = vunpack.c.l.b16 %v5468
  %v6872 = vunpack.c.h.b16 %v5468
  %v6873 = vunpack.c.l.b16 %v5469
  %v6874 = vunpack.c.l.b16 %v5470
  %v6875 = vunpack.c.h.b16 %v5470
  %v6876 = vunpack.c.l.b16 %v5471
  %v6877 = vunpack.c.l.b16 %v5472
  %v6878 = vunpack.c.h.b16 %v5472
  %v6879 = vunpack.c.l.b16 %v5473
  %v6880 = vunpack.c.l.b16 %v5474
  %v6881 = vunpack.c.h.b16 %v5474
  %v6882 = vunpack.c.l.b16 %v5475
  %v6883 = vunpack.c.l.b16 %v5476
  %v6884 = vunpack.c.h.b16 %v5476
  %v6885 = vunpack.c.l.b16 %v5477
  %v6886 = vunpack.c.l.b16 %v5478
  %v6887 = vunpack.c.h.b16 %v5478
  %v6888 = vunpack.c.l.b16 %v5479
  %v6889 = vunpack.c.l.b16 %v5480
  %v6890 = vunpack.c.h.b16 %v5480
  %v6891 = vunpack.c.l.b16 %v5481
  %v6892 = vunpack.c.l.b16 %v5482
  %v6893 = vunpack.c.h.b16 %v5482
  %v6894 = vunpack.c.l.b16 %v5483
  %v6895 = vunpack.c.l.b16 %v5484
  %v6896 = vunpack.c.h.b16 %v5484
  %v6897 = vunpack.c.l.b16 %v5485
  %v6898 = vunpack.c.l.b16 %v5486
  %v6899 = vunpack.c.h.b16 %v5486
  %v6900 = vunpack.c.l.b16 %v5487
  %v6901 = vunpack.c.l.b16 %v5488
  %v6902 = vunpack.c.h.b16 %v5488
  %v6903 = vunpack.c.l.b16 %v5489
  %v6904 = vunpack.c.l.b16 %v5490
  %v6905 = vunpack.c.h.b16 %v5490
  %v6906 = vunpack.c.l.b16 %v5491
  %v6907 = vunpack.c.l.b16 %v5492
  %v6908 = vunpack.c.h.b16 %v5492
  %v6909 = vunpack.c.l.b16 %v5493
  %v6910 = vunpack.c.l.b16 %v5494
  %v6911 = vunpack.c.h.b16 %v5494
  %v6912 = vunpack.c.l.b16 %v5495
  %v6913 = vunpack.c.l.b16 %v5496
  %v6914 = vunpack.c.h.b16 %v5496
  %v6915 = vunpack.c.l.b16 %v5497
  %v6916 = vunpack.c.l.b16 %v5498
  %v6917 = vunpack.c.h.b16 %v5498
  %v6918 = vunpack.c.l.b16 %v5499
  %v6919 = vunpack.c.l.b16 %v5500
  %v6920 = vunpack.c.h.b16 %v5500
  %v6921 = vunpack.c.l.b16 %v5501
  %v6922 = vunpack.c.l.b16 %v5502
  %v6923 = vunpack.c.h.b16 %v5502
  %v6924 = vunpack.c.l.b16 %v5503
  %v6925 = vunpack.c.l.b16 %v5504
  %v6926 = vunpack.c.h.b16 %v5504
  %v6927 = vunpack.c.l.b16 %v5505
  %v6928 = vunpack.c.l.b16 %v5506
  %v6929 = vunpack.c.h.b16 %v5506
  %v6930 = vunpack.c.l.b16 %v5507
  %v6931 = vunpack.c.l.b16 %v5508
  %v6932 = vunpack.c.h.b16 %v5508
  %v6933 = vunpack.c.l.b16 %v5509
  %v6934 = vunpack.c.l.b16 %v5510
  %v6935 = vunpack.c.h.b16 %v5510
  %v6936 = vunpack.c.l.b16 %v5511
  %v6937 = vunpack.c.l.b16 %v5512
  %v6938 = vunpack.c.h.b16 %v5512
  %v6939 = vunpack.c.l.b16 %v5513
  %v6940 = vunpack.c.l.b16 %v5514
  %v6941 = vunpack.c.h.b16 %v5514
  %v6942 = vunpack.c.l.b16 %v5515
  %v6943 = vunpack.c.l.b16 %v5516
  %v6944 = vunpack.c.h.b16 %v5516
  %v6945 = vunpack.c.l.b16 %v5517
  %v6946 = vunpack.c.l.b16 %v5518
  %v6947 = vunpack.c.h.b16 %v5518
  %v6948 = vunpack.c.l.b16 %v5519
  %v6949 = vunpack.c.l.b16 %v5520
  %v6950 = vunpack.c.h.b16 %v5520
  %v6951 = vunpack.c.l.b16 %v5521
  %v6952 = vunpack.c.l.b16 %v5522
  %v6953 = vunpack.c.h.b16 %v5522
  %v6954 = vunpack.c.l.b16 %v5523
  %v6955 = vunpack.c.l.b16 %v5524
  %v6956 = vunpack.c.h.b16 %v5524
  %v6957 = vunpack.c.l.b16 %v5525
  %v6958 = vunpack.c.l.b16 %v5526
  %v6959 = vunpack.c.h.b16 %v5526
  %v6960 = vunpack.c.l.b16 %v5527
  %v6961 = vunpack.c.l.b16 %v5528
  %v6962 = vunpack.c.h.b16 %v5528
  %v6963 = vunpack.c.l.b16 %v5529
  %v6964 = vunpack.c.l.b16 %v5530
  %v6965 = vunpack.c.h.b16 %v5530
  %v6966 = vunpack.c.l.b16 %v5531
  %v6967 = vunpack.c.l.b16 %v5532
  %v6968 = vunpack.c.h.b16 %v5532
  %v6969 = vunpack.c.l.b16 %v5533
  %v6970 = vunpack.c.l.b16 %v5534
  %v6971 = vunpack.c.h.b16 %v5534
  %v6972 = vunpack.c.l.b16 %v5535
  %v6973 = vunpack.c.l.b16 %v5536
  %v6974 = vunpack.c.h.b16 %v5536
  %v6975 = vunpack.c.l.b16 %v5537
  %v6976 = vunpack.c.l.b16 %v5538
  %v6977 = vunpack.c.h.b16 %v5538
  %v6978 = vunpack.c.l.b16 %v5539
  %v6979 = vunpack.c.l.b16 %v5540
  %v6980 = vunpack.c.h.b16 %v5540
  %v6981 = vunpack.c.l.b16 %v5541
  %v6982 = vunpack.c.l.b16 %v5542
  %v6983 = vunpack.c.h.b16 %v5542
  %v6984 = vunpack.c.l.b16 %v5543
  %v6985 = vunpack.c.l.b16 %v5544
  %v6986 = vunpack.c.h.b16 %v5544
  %v6987 = vunpack.c.l.b16 %v5545
  %v6988 = vunpack.c.l.b16 %v5546
  %v6989 = vunpack.c.h.b16 %v5546
  %v6990 = vunpack.c.l.b16 %v5547
  %v6991 = vunpack.c.l.b16 %v5548
  %v6992 = vunpack.c.h.b16 %v5548
  %v6993 = vunpack.c.l.b16 %v5549
  %v6994 = vunpack.c.l.b16 %v5550
  %v6995 = vunpack.c.h.b16 %v5550
  %v6996 = vunpack.c.l.b16 %v5551
  %v6997 = vunpack.c.l.b16 %v5552
  %v6998 = vunpack.c.h.b16 %v5552
  %v6999 = vunpack.c.l.b16 %v5553
  %v7000 = vunpack.c.l.b16 %v5554
  %v7001 = vunpack.c.h.b16 %v5554
  %v7002 = vunpack.c.l.b16 %v5555
  %v7003 = vunpack.c.l.b16 %v5556
  %v7004 = vunpack.c.h.b16 %v5556
  %v7005 = vunpack.c.l.b16 %v5557
  %v7006 = vunpack.c.l.b16 %v5558
  %v7007 = vunpack.c.h.b16 %v5558
  %v7008 = vunpack.c.l.b16 %v5559
  %v7009 = vunpack.c.l.b16 %v5560
  %v7010 = vunpack.c.h.b16 %v5560
  %v7011 = vunpack.c.l.b16 %v5561
  %v7012 = vunpack.c.l.b16 %v5562
  %v7013 = vunpack.c.h.b16 %v5562
  %v7014 = vunpack.c.l.b16 %v5563
  %v7015 = vunpack.c.l.b16 %v5564
  %v7016 = vunpack.c.h.b16 %v5564
  %v7017 = vunpack.c.l.b16 %v5565
  %v7018 = vunpack.c.l.b16 %v5566
  %v7019 = vunpack.c.h.b16 %v5566
  %v7020 = vunpack.c.l.b16 %v5567
  %v7021 = vunpack.c.l.b16 %v5568
  %v7022 = vunpack.c.h.b16 %v5568
  %v7023 = vunpack.c.l.b16 %v5569
  %v7024 = vunpack.c.l.b16 %v5570
  %v7025 = vunpack.c.h.b16 %v5570
  %v7026 = vunpack.c.l.b16 %v5571
  %v7027 = vunpack.c.l.b16 %v5572
  %v7028 = vunpack.c.h.b16 %v5572
  %v7029 = vunpack.c.l.b16 %v5573
  %v7030 = vunpack.c.l.b16 %v5574
  %v7031 = vunpack.c.h.b16 %v5574
  %v7032 = vunpack.c.l.b16 %v5575
  %v7033 = vunpack.c.l.b16 %v5576
  %v7034 = vunpack.c.h.b16 %v5576
  %v7035 = vunpack.c.l.b16 %v5577
  %v7036 = vunpack.c.l.b16 %v5578
  %v7037 = vunpack.c.h.b16 %v5578
  %v7038 = vunpack.c.l.b16 %v5579
  %v7039 = vunpack.c.l.b16 %v5580
  %v7040 = vunpack.c.h.b16 %v5580
  %v7041 = vunpack.c.l.b16 %v5581
  %v7042 = vunpack.c.l.b16 %v5582
  %v7043 = vunpack.c.h.b16 %v5582
  %v7044 = vunpack.c.l.b16 %v5583
  %v7045 = vunpack.c.l.b16 %v5584
  %v7046 = vunpack.c.h.b16 %v5584
  %v7047 = vunpack.c.l.b16 %v5585
  %v7048 = vunpack.c.l.b16 %v5586
  %v7049 = vunpack.c.h.b16 %v5586
  %v7050 = vunpack.c.l.b16 %v5587
  %v7051 = vunpack.c.l.b16 %v5588
  %v7052 = vunpack.c.h.b16 %v5588
  %v7053 = vunpack.c.l.b16 %v5589
  %v7054 = vunpack.c.l.b16 %v5590
  %v7055 = vunpack.c.h.b16 %v5590
  %v7056 = vunpack.c.l.b16 %v5591
  %v7057 = vunpack.c.l.b16 %v5592
  %v7058 = vunpack.c.h.b16 %v5592
  %v7059 = vunpack.c.l.b16 %v5593
  %v7060 = vunpack.c.l.b16 %v5594
  %v7061 = vunpack.c.h.b16 %v5594
  %v7062 = vunpack.c.l.b16 %v5595
  %v7063 = vunpack.c.l.b16 %v5596
  %v7064 = vunpack.c.h.b16 %v5596
  %v7065 = vunpack.c.l.b16 %v5597
  %v7066 = vunpack.c.l.b16 %v5598
  %v7067 = vunpack.c.h.b16 %v5598
  %v7068 = vunpack.c.l.b16 %v5599
  %v7069 = vunpack.c.l.b16 %v5600
  %v7070 = vunpack.c.h.b16 %v5600
  %v7071 = vunpack.c.l.b16 %v5601
  %v7072 = vunpack.c.l.b16 %v5602
  %v7073 = vunpack.c.h.b16 %v5602
  %v7074 = vunpack.c.l.b16 %v5603
  %v7075 = vunpack.c.l.b16 %v5604
  %v7076 = vunpack.c.h.b16 %v5604
  %v7077 = vunpack.c.l.b16 %v5605
  %v7078 = vunpack.c.l.b16 %v5606
  %v7079 = vunpack.c.h.b16 %v5606
  %v7080 = vunpack.c.l.b16 %v5607
  %v7081 = vunpack.c.l.b16 %v5608
  %v7082 = vunpack.c.h.b16 %v5608
  %v7083 = vunpack.c.l.b16 %v5609
  %v7084 = vunpack.c.l.b16 %v5610
  %v7085 = vunpack.c.h.b16 %v5610
  %v7086 = vunpack.c.l.b16 %v5611
  %v7087 = vunpack.c.l.b16 %v5612
  %v7088 = vunpack.c.h.b16 %v5612
  %v7089 = vunpack.c.l.b16 %v5613
  %v7090 = vunpack.c.l.b16 %v5614
  %v7091 = vunpack.c.h.b16 %v5614
  %v7092 = vunpack.c.l.b16 %v5615
  %v7093 = vunpack.c.l.b16 %v5616
  %v7094 = vunpack.c.h.b16 %v5616
  %v7095 = vunpack.c.l.b16 %v5617
  %v7096 = vunpack.c.l.b16 %v5618
  %v7097 = vunpack.c.h.b16 %v5618
  %v7098 = vunpack.c.l.b16 %v5619
  %v7099 = vunpack.c.l.b16 %v5620
  %v7100 = vunpack.c.h.b16 %v5620
  %v7101 = vunpack.c.l.b16 %v5621
  %v7102 = vunpack.c.l.b16 %v5622
  %v7103 = vunpack.c.h.b16 %v5622
  %v7104 = vunpack.c.l.b16 %v5623
  %v7105 = vunpack.c.l.b16 %v5624
  %v7106 = vunpack.c.h.b16 %v5624
  %v7107 = vunpack.c.l.b16 %v5625
  %v7108 = vunpack.c.l.b16 %v5626
  %v7109 = vunpack.c.h.b16 %v5626
  %v7110 = vunpack.c.l.b16 %v5627
  %v7111 = vunpack.c.l.b16 %v5628
  %v7112 = vunpack.c.h.b16 %v5628
  %v7113 = vunpack.c.l.b16 %v5629
  %v7114 = vunpack.c.l.b16 %v5630
  %v7115 = vunpack.c.h.b16 %v5630
  %v7116 = vunpack.c.l.b16 %v5631
  %v7117 = vunpack.c.l.b16 %v5632
  %v7118 = vunpack.c.h.b16 %v5632
  %v7119 = vunpack.c.l.b16 %v5633
  %v7120 = vunpack.c.l.b16 %v5634
  %v7121 = vunpack.c.h.b16 %v5634
  %v7122 = vunpack.c.l.b16 %v5635
  %v7123 = vunpack.c.l.b16 %v5636
  %v7124 = vunpack.c.h.b16 %v5636
  %v7125 = vunpack.c.l.b16 %v5637
  %v7126 = vunpack.c.l.b16 %v5638
  %v7127 = vunpack.c.h.b16 %v5638
  %v7128 = vunpack.c.l.b16 %v5639
  %v7129 = vunpack.c.l.b16 %v5640
  %v7130 = vunpack.c.h.b16 %v5640
  %v7131 = vunpack.c.l.b16 %v5641
  %v7132 = vunpack.c.l.b16 %v5642
  %v7133 = vunpack.c.h.b16 %v5642
  %v7134 = vunpack.c.l.b16 %v5643
  %v7135 = vunpack.c.l.b16 %v5644
  %v7136 = vunpack.c.h.b16 %v5644
  %v7137 = vunpack.c.l.b16 %v5645
  %v7138 = vunpack.c.l.b16 %v5646
  %v7139 = vunpack.c.h.b16 %v5646
  %v7140 = vunpack.c.l.b16 %v5647
  %v7141 = vunpack.c.l.b16 %v5648
  %v7142 = vunpack.c.h.b16 %v5648
  %v7143 = vunpack.c.l.b16 %v5649
  %v7144 = vunpack.c.l.b16 %v5650
  %v7145 = vunpack.c.h.b16 %v5650
  %v7146 = vunpack.c.l.b16 %v5651
  %v7147 = vunpack.c.l.b16 %v5652
  %v7148 = vunpack.c.h.b16 %v5652
  %v7149 = vunpack.c.l.b16 %v5653
  %v7150 = vunpack.c.l.b16 %v5654
  %v7151 = vunpack.c.h.b16 %v5654
  %v7152 = vunpack.c.l.b16 %v5655
  %v7153 = vunpack.c.l.b16 %v5656
  %v7154 = vunpack.c.h.b16 %v5656
  %v7155 = vunpack.c.l.b16 %v5657
  %v7156 = vunpack.c.l.b16 %v5658
  %v7157 = vunpack.c.h.b16 %v5658
  %v7158 = vunpack.c.l.b16 %v5659
  %v7159 = vunpack.c.l.b16 %v5660
  %v7160 = vunpack.c.h.b16 %v5660
  %v7161 = vunpack.c.l.b16 %v5661
  %v7162 = vunpack.c.l.b16 %v5662
  %v7163 = vunpack.c.h.b16 %v5662
  %v7164 = vunpack.c.l.b16 %v5663
  %v7165 = vunpack.c.l.b16 %v5664
  %v7166 = vunpack.c.h.b16 %v5664
  %v7167 = vunpack.c.l.b16 %v5665
  %v7168 = vunpack.c.l.b16 %v5666
  %v7169 = vunpack.c.h.b16 %v5666
  %v7170 = vunpack.c.l.b16 %v5667
  %v7171 = vunpack.c.l.b16 %v5668
  %v7172 = vunpack.c.h.b16 %v5668
  %v7173 = vunpack.c.l.b16 %v5669
  %v7174 = vunpack.c.l.b16 %v5670
  %v7175 = vunpack.c.h.b16 %v5670
  %v7176 = vunpack.c.l.b16 %v5671
  %v7177 = vunpack.c.l.b16 %v5672
  %v7178 = vunpack.c.h.b16 %v5672
  %v7179 = vunpack.c.l.b16 %v5673
  %v7180 = vunpack.c.l.b16 %v5674
  %v7181 = vunpack.c.h.b16 %v5674
  %v7182 = vunpack.c.l.b16 %v5675
  %v7183 = vunpack.c.l.b16 %v5676
  %v7184 = vunpack.c.h.b16 %v5676
  %v7185 = vunpack.c.l.b16 %v5677
  %v7186 = vunpack.c.l.b16 %v5678
  %v7187 = vunpack.c.h.b16 %v5678
  %v7188 = vunpack.c.l.b16 %v5679
  %v7189 = vunpack.c.l.b16 %v5680
  %v7190 = vunpack.c.h.b16 %v5680
  %v7191 = vunpack.c.l.b16 %v5681
  %v7192 = vunpack.c.l.b16 %v5682
  %v7193 = vunpack.c.h.b16 %v5682
  %v7194 = vunpack.c.l.b16 %v5683
  %v7195 = vunpack.c.l.b16 %v5684
  %v7196 = vunpack.c.h.b16 %v5684
  %v7197 = vunpack.c.l.b16 %v5685
  %v7198 = vunpack.c.l.b16 %v5686
  %v7199 = vunpack.c.h.b16 %v5686
  %v7200 = vunpack.c.l.b16 %v5687
  %v7201 = vunpack.c.l.b16 %v5688
  %v7202 = vunpack.c.h.b16 %v5688
  %v7203 = vunpack.c.l.b16 %v5689
  %v7204 = vunpack.c.l.b16 %v5690
  %v7205 = vunpack.c.h.b16 %v5690
  %v7206 = vunpack.c.l.b16 %v5691
  %v7207 = vunpack.c.l.b16 %v5692
  %v7208 = vunpack.c.h.b16 %v5692
  %v7209 = vunpack.c.l.b16 %v5693
  %v7210 = vunpack.c.l.b16 %v5694
  %v7211 = vunpack.c.h.b16 %v5694
  %v7212 = vunpack.c.l.b16 %v5695
  %v7213 = vunpack.c.l.b16 %v5696
  %v7214 = vunpack.c.h.b16 %v5696
  %v7215 = vunpack.c.l.b16 %v5697
  %v7216 = vunpack.c.l.b16 %v5698
  %v7217 = vunpack.c.h.b16 %v5698
  %v7218 = vunpack.c.l.b16 %v5699
  %v7219 = vunpack.c.l.b16 %v5700
  %v7220 = vunpack.c.h.b16 %v5700
  %v7221 = vunpack.c.l.b16 %v5701
  %v7222 = vunpack.c.l.b16 %v5702
  %v7223 = vunpack.c.h.b16 %v5702
  %v7224 = vunpack.c.l.b16 %v5703
  %v7225 = vunpack.c.l.b16 %v5704
  %v7226 = vunpack.c.h.b16 %v5704
  %v7227 = vunpack.c.l.b16 %v5705
  %v7228 = vunpack.c.l.b16 %v5706
  %v7229 = vunpack.c.h.b16 %v5706
  %v7230 = vunpack.c.l.b16 %v5707
  %v7231 = vunpack.c.l.b16 %v5708
  %v7232 = vunpack.c.h.b16 %v5708
  %v7233 = vunpack.c.l.b16 %v5709
  %v7234 = vunpack.c.l.b16 %v5710
  %v7235 = vunpack.c.h.b16 %v5710
  %v7236 = vunpack.c.l.b16 %v5711
  %v7237 = vunpack.c.l.b16 %v5712
  %v7238 = vunpack.c.h.b16 %v5712
  %v7239 = vunpack.c.l.b16 %v5713
  %v7240 = vunpack.c.l.b16 %v5714
  %v7241 = vunpack.c.h.b16 %v5714
  %v7242 = vunpack.c.l.b16 %v5715
  %v7243 = vunpack.c.l.b16 %v5716
  %v7244 = vunpack.c.h.b16 %v5716
  %v7245 = vunpack.c.l.b16 %v5717
  %v7246 = vunpack.c.l.b16 %v5718
  %v7247 = vunpack.c.h.b16 %v5718
  %v7248 = vunpack.c.l.b16 %v5719
  %v7249 = vunpack.c.l.b16 %v5720
  %v7250 = vunpack.c.h.b16 %v5720
  %v7251 = vunpack.c.l.b16 %v5721
  %v7252 = vunpack.c.l.b16 %v5722
  %v7253 = vunpack.c.h.b16 %v5722
  %v7254 = vunpack.c.l.b16 %v5723
  %v7255 = vunpack.c.l.b16 %v5724
  %v7256 = vunpack.c.h.b16 %v5724
  %v7257 = vunpack.c.l.b16 %v5725
  %v7258 = vunpack.c.l.b16 %v5726
  %v7259 = vunpack.c.h.b16 %v5726
  %v7260 = vunpack.c.l.b16 %v5727
  %v7261 = vunpack.c.l.b16 %v5728
  %v7262 = vunpack.c.h.b16 %v5728
  %v7263 = vunpack.c.l.b16 %v5729
  %v7264 = vunpack.c.l.b16 %v5730
  %v7265 = vunpack.c.h.b16 %v5730
  %v7266 = vunpack.c.l.b16 %v5731
  %v7267 = vunpack.c.l.b16 %v5732
  %v7268 = vunpack.c.h.b16 %v5732
  %v7269 = vunpack.c.l.b16 %v5733
  %v7270 = vunpack.c.l.b16 %v5734
  %v7271 = vunpack.c.h.b16 %v5734
  %v7272 = vunpack.c.l.b16 %v5735
  %v7273 = vunpack.c.l.b16 %v5736
  %v7274 = vunpack.c.h.b16 %v5736
  %v7275 = vunpack.c.l.b16 %v5737
  %v7276 = vunpack.c.l.b16 %v5738
  %v7277 = vunpack.c.h.b16 %v5738
  %v7278 = vunpack.c.l.b16 %v5739
  %v7279 = vunpack.c.l.b16 %v5740
  %v7280 = vunpack.c.h.b16 %v5740
  %v7281 = vunpack.c.l.b16 %v5741
  %v7282 = vunpack.c.l.b16 %v5742
  %v7283 = vunpack.c.h.b16 %v5742
  %v7284 = vunpack.c.l.b16 %v5743
  %v7285 = vunpack.c.l.b16 %v5744
  %v7286 = vunpack.c.h.b16 %v5744
  %v7287 = vunpack.c.l.b16 %v5745
  %v7288 = vunpack.c.l.b16 %v5746
  %v7289 = vunpack.c.h.b16 %v5746
  %v7290 = vunpack.c.l.b16 %v5747
  %v7291 = vunpack.c.l.b16 %v5748
  %v7292 = vunpack.c.h.b16 %v5748
  %v7293 = vunpack.c.l.b16 %v5749
  %v7294 = vunpack.c.l.b16 %v5750
  %v7295 = vunpack.c.h.b16 %v5750
  %v7296 = vunpack.c.l.b16 %v5751
  %v7297 = vunpack.c.l.b16 %v5752
  %v7298 = vunpack.c.h.b16 %v5752
  %v7299 = vunpack.c.l.b16 %v5753
  %v7300 = vunpack.c.l.b16 %v5754
  %v7301 = vunpack.c.h.b16 %v5754
  %v7302 = vunpack.c.l.b16 %v5755
  %v7303 = vunpack.c.l.b16 %v5756
  %v7304 = vunpack.c.h.b16 %v5756
  %v7305 = vunpack.c.l.b16 %v5757
  %v7306 = vunpack.c.l.b16 %v5758
  %v7307 = vunpack.c.h.b16 %v5758
  %v7308 = vunpack.c.l.b16 %v5759
  %v7309 = vunpack.c.l.b16 %v5760
  %v7310 = vunpack.c.h.b16 %v5760
  %v7311 = vunpack.c.l.b16 %v5761
  %v7312 = vunpack.c.l.b16 %v5762
  %v7313 = vunpack.c.h.b16 %v5762
  %v7314 = vunpack.c.l.b16 %v5763
  %v7315 = vunpack.c.l.b16 %v5764
  %v7316 = vunpack.c.h.b16 %v5764
  %v7317 = vunpack.c.l.b16 %v5765
  %v7318 = vunpack.c.l.b16 %v5766
  %v7319 = vunpack.c.h.b16 %v5766
  %v7320 = vunpack.c.l.b16 %v5767
  %v7321 = vunpack.c.l.b16 %v5768
  %v7322 = vunpack.c.h.b16 %v5768
  %v7323 = vunpack.c.l.b16 %v5769
  %v7324 = vunpack.c.l.b16 %v5770
  %v7325 = vunpack.c.h.b16 %v5770
  %v7326 = vunpack.c.l.b16 %v5771
  %v7327 = vunpack.c.l.b16 %v5772
  %v7328 = vunpack.c.h.b16 %v5772
  %v7329 = vunpack.c.l.b16 %v5773
  %v7330 = vunpack.c.l.b16 %v5774
  %v7331 = vunpack.c.h.b16 %v5774
  %v7332 = vunpack.c.l.b16 %v5775
  %v7333 = vunpack.c.l.b16 %v5776
  %v7334 = vunpack.c.h.b16 %v5776
  %v7335 = vunpack.c.l.b16 %v5777
  %v7336 = vunpack.c.l.b16 %v5778
  %v7337 = vunpack.c.h.b16 %v5778
  %v7338 = vunpack.c.l.b16 %v5779
  %v7339 = vunpack.c.l.b16 %v5780
  %v7340 = vunpack.c.h.b16 %v5780
  %v7341 = vunpack.c.l.b16 %v5781
  %v7342 = vunpack.c.l.b16 %v5782
  %v7343 = vunpack.c.h.b16 %v5782
  %v7344 = vunpack.c.l.b16 %v5783
  %v7345 = vunpack.c.l.b16 %v5784
  %v7346 = vunpack.c.h.b16 %v5784
  %v7347 = vunpack.c.l.b16 %v5785
  %v7348 = vunpack.c.l.b16 %v5786
  %v7349 = vunpack.c.h.b16 %v5786
  %v7350 = vunpack.c.l.b16 %v5787
  %v7351 = vunpack.c.l.b16 %v5788
  %v7352 = vunpack.c.h.b16 %v5788
  %v7353 = vunpack.c.l.b16 %v5789
  %v7354 = vunpack.c.l.b16 %v5790
  %v7355 = vunpack.c.h.b16 %v5790
  %v7356 = vunpack.c.l.b16 %v5791
  %v7357 = vunpack.c.l.b16 %v5792
  %v7358 = vunpack.c.h.b16 %v5792
  %v7359 = vunpack.c.l.b16 %v5793
  %v7360 = vunpack.c.l.b16 %v5794
  %v7361 = vunpack.c.h.b16 %v5794
  %v7362 = vunpack.c.l.b16 %v5795
  %v7363 = vunpack.c.l.b16 %v5796
  %v7364 = vunpack.c.h.b16 %v5796
  %v7365 = vunpack.c.l.b16 %v5797
  %v7366 = vunpack.c.l.b16 %v5798
  %v7367 = vunpack.c.h.b16 %v5798
  %v7368 = vunpack.c.l.b16 %v5799
  %v7369 = vunpack.c.l.b16 %v5800
  %v7370 = vunpack.c.h.b16 %v5800
  %v7371 = vunpack.c.l.b16 %v5801
  %v7372 = vunpack.c.l.b16 %v5802
  %v7373 = vunpack.c.h.b16 %v5802
  %v7374 = vunpack.c.l.b16 %v5803
  %v7375 = vunpack.c.l.b16 %v5804
  %v7376 = vunpack.c.h.b16 %v5804
  %v7377 = vunpack.c.l.b16 %v5805
  %v7378 = vunpack.c.l.b16 %v5806
  %v7379 = vunpack.c.h.b16 %v5806
  %v7380 = vunpack.c.l.b16 %v5807
  %v7381 = vunpack.c.l.b16 %v5808
  %v7382 = vunpack.c.h.b16 %v5808
  %v7383 = vunpack.c.l.b16 %v5809
  %v7384 = vunpack.c.l.b16 %v5810
  %v7385 = vunpack.c.h.b16 %v5810
  %v7386 = vunpack.c.l.b16 %v5811
  %v7387 = vunpack.c.l.b16 %v5812
  %v7388 = vunpack.c.h.b16 %v5812
  %v7389 = vunpack.c.l.b16 %v5813
  %v7390 = vunpack.c.l.b16 %v5814
  %v7391 = vunpack.c.h.b16 %v5814
  %v7392 = vunpack.c.l.b16 %v5815
  %v7393 = vunpack.c.l.b16 %v5816
  %v7394 = vunpack.c.h.b16 %v5816
  %v7395 = vunpack.c.l.b16 %v5817
  %v7396 = vunpack.c.l.b16 %v5818
  %v7397 = vunpack.c.h.b16 %v5818
  %v7398 = vunpack.c.l.b16 %v5819
  %v7399 = vunpack.c.l.b16 %v5820
  %v7400 = vunpack.c.h.b16 %v5820
  %v7401 = vunpack.c.l.b16 %v5821
  %v7402 = vunpack.c.l.b16 %v5822
  %v7403 = vunpack.c.h.b16 %v5822
  %v7404 = vunpack.c.l.b16 %v5823
  %v7405 = vunpack.c.l.b16 %v5824
  %v7406 = vunpack.c.h.b16 %v5824
  %v7407 = vunpack.c.l.b16 %v5825
  %v7408 = vunpack.c.l.b16 %v5826
  %v7409 = vunpack.c.h.b16 %v5826
  %v7410 = vunpack.c.l.b16 %v5827
  %v7411 = vunpack.c.l.b16 %v5828
  %v7412 = vunpack.c.h.b16 %v5828
  %v7413 = vunpack.c.l.b16 %v5829
  %v7414 = vunpack.c.l.b16 %v5830
  %v7415 = vunpack.c.h.b16 %v5830
  %v7416 = vunpack.c.l.b16 %v5831
  %v7417 = vunpack.c.l.b16 %v5832
  %v7418 = vunpack.c.h.b16 %v5832
  %v7419 = vunpack.c.l.b16 %v5833
  %v7420 = vunpack.c.l.b16 %v5834
  %v7421 = vunpack.c.h.b16 %v5834
  %v7422 = vunpack.c.l.b16 %v5835
  %v7423 = vunpack.c.l.b16 %v5836
  %v7424 = vunpack.c.h.b16 %v5836
  %v7425 = vunpack.c.l.b16 %v5837
  %v7426 = vunpack.c.l.b16 %v5838
  %v7427 = vunpack.c.h.b16 %v5838
  %v7428 = vunpack.c.l.b16 %v5839
  %v7429 = vunpack.c.l.b16 %v5840
  %v7430 = vunpack.c.h.b16 %v5840
  %v7431 = vunpack.c.l.b16 %v5841
  %v7432 = vunpack.c.l.b16 %v5842
  %v7433 = vunpack.c.h.b16 %v5842
  %v7434 = vunpack.c.l.b16 %v5843
  %v7435 = vunpack.c.l.b16 %v5844
  %v7436 = vunpack.c.h.b16 %v5844
  %v7437 = vunpack.c.l.b16 %v5845
  %v7438 = vunpack.c.l.b16 %v5846
  %v7439 = vunpack.c.h.b16 %v5846
  %v7440 = vunpack.c.l.b16 %v5847
  %v7441 = vunpack.c.l.b16 %v5848
  %v7442 = vunpack.c.h.b16 %v5848
  %v7443 = vunpack.c.l.b16 %v5849
  %v7444 = vunpack.c.l.b16 %v5850
  %v7445 = vunpack.c.h.b16 %v5850
  %v7446 = vunpack.c.l.b16 %v5851
  %v7447 = vunpack.c.l.b16 %v5852
  %v7448 = vunpack.c.h.b16 %v5852
  %v7449 = vunpack.c.l.b16 %v5853
  %v7450 = vunpack.c.l.b16 %v5854
  %v7451 = vunpack.c.h.b16 %v5854
  %v7452 = vunpack.c.l.b16 %v5855
  %v7453 = vunpack.c.l.b16 %v5856
  %v7454 = vunpack.c.h.b16 %v5856
  %v7455 = vunpack.c.l.b16 %v5857
  %v7456 = vunpack.c.l.b16 %v5858
  %v7457 = vunpack.c.h.b16 %v5858
  %v7458 = vunpack.c.l.b16 %v5859
  %v7459 = vunpack.c.l.b16 %v5860
  %v7460 = vunpack.c.h.b16 %v5860
  %v7461 = vunpack.c.l.b16 %v5861
  %v7462 = vunpack.c.l.b16 %v5862
  %v7463 = vunpack.c.h.b16 %v5862
  %v7464 = vunpack.c.l.b16 %v5863
  %v7465 = vunpack.c.l.b16 %v5864
  %v7466 = vunpack.c.h.b16 %v5864
  %v7467 = vunpack.c.l.b16 %v5865
  %v7468 = vunpack.c.l.b16 %v5866
  %v7469 = vunpack.c.h.b16 %v5866
  %v7470 = vunpack.c.l.b16 %v5867
  %v7471 = vunpack.c.l.b16 %v5868
  %v7472 = vunpack.c.h.b16 %v5868
  %v7473 = vunpack.c.l.b16 %v5869
  %v7474 = vunpack.c.l.b16 %v5870
  %v7475 = vunpack.c.h.b16 %v5870
  %v7476 = vunpack.c.l.b16 %v5871
  %v7477 = vunpack.c.l.b16 %v5872
  %v7478 = vunpack.c.h.b16 %v5872
  %v7479 = vunpack.c.l.b16 %v5873
  %v7480 = vunpack.c.l.b16 %v5874
  %v7481 = vunpack.c.h.b16 %v5874
  %v7482 = vunpack.c.l.b16 %v5875
  %v7483 = vunpack.c.l.b16 %v5876
  %v7484 = vunpack.c.h.b16 %v5876
  %v7485 = vunpack.c.l.b16 %v5877
  %v7486 = vunpack.c.l.b16 %v5878
  %v7487 = vunpack.c.h.b16 %v5878
  %v7488 = vunpack.c.l.b16 %v5879
  %v7489 = vunpack.c.l.b16 %v5880
  %v7490 = vunpack.c.h.b16 %v5880
  %v7491 = vunpack.c.l.b16 %v5881
  %v7492 = vunpack.c.l.b16 %v5882
  %v7493 = vunpack.c.h.b16 %v5882
  %v7494 = vunpack.c.l.b16 %v5883
  %v7495 = vunpack.c.l.b16 %v5884
  %v7496 = vunpack.c.h.b16 %v5884
  %v7497 = vunpack.c.l.b16 %v5885
  %v7498 = vunpack.c.l.b16 %v5886
  %v7499 = vunpack.c.h.b16 %v5886
  %v7500 = vunpack.c.l.b16 %v5887
  %v7501 = vunpack.c.l.b16 %v5888
  %v7502 = vunpack.c.h.b16 %v5888
  %v7503 = vunpack.c.l.b16 %v5889
  %v7504 = vunpack.c.l.b16 %v5890
  %v7505 = vunpack.c.h.b16 %v5890
  %v7506 = vunpack.c.l.b16 %v5891
  %v7507 = vunpack.c.l.b16 %v5892
  %v7508 = vunpack.c.h.b16 %v5892
  %v7509 = vunpack.c.l.b16 %v5893
  %v7510 = vunpack.c.l.b16 %v5894
  %v7511 = vunpack.c.h.b16 %v5894
  %v7512 = vunpack.c.l.b16 %v5895
  %v7513 = vunpack.c.l.b16 %v5896
  %v7514 = vunpack.c.h.b16 %v5896
  %v7515 = vunpack.c.l.b16 %v5897
  %v7516 = vunpack.c.l.b16 %v5898
  %v7517 = vunpack.c.h.b16 %v5898
  %v7518 = vunpack.c.l.b16 %v5899
  %v7519 = vunpack.c.l.b16 %v5900
  %v7520 = vunpack.c.h.b16 %v5900
  %v7521 = vunpack.c.l.b16 %v5901
  %v7522 = vpack.c.b16 %v6661, %v6658
  %v7523 = vpack.c.b16 %v6662, %v6659
  %v7524 = vpack.c.b16 %v6663, %v6660
  %v7525 = vpack.c.b16 %v6667, %v6664
  %v7526 = vpack.c.b16 %v6668, %v6665
  %v7527 = vpack.c.b16 %v6669, %v6666
  %v7528 = vpack.c.b16 %v6673, %v6670
  %v7529 = vpack.c.b16 %v6674, %v6671
  %v7530 = vpack.c.b16 %v6675, %v6672
  %v7531 = vpack.c.b16 %v6679, %v6676
  %v7532 = vpack.c.b16 %v6680, %v6677
  %v7533 = vpack.c.b16 %v6681, %v6678
  %v7534 = vpack.c.b16 %v6685, %v6682
  %v7535 = vpack.c.b16 %v6686, %v6683
  %v7536 = vpack.c.b16 %v6687, %v6684
  %v7537 = vpack.c.b16 %v6691, %v6688
  %v7538 = vpack.c.b16 %v6692, %v6689
  %v7539 = vpack.c.b16 %v6693, %v6690
  %v7540 = vpack.c.b16 %v6697, %v6694
  %v7541 = vpack.c.b16 %v6698, %v6695
  %v7542 = vpack.c.b16 %v6699, %v6696
  %v7543 = vpack.c.b16 %v6703, %v6700
  %v7544 = vpack.c.b16 %v6704, %v6701
  %v7545 = vpack.c.b16 %v6705, %v6702
  %v7546 = vpack.c.b16 %v6709, %v6706
  %v7547 = vpack.c.b16 %v6710, %v6707
  %v7548 = vpack.c.b16 %v6711, %v6708
  %v7549 = vpack.c.b16 %v6715, %v6712
  %v7550 = vpack.c.b16 %v6716, %v6713
  %v7551 = vpack.c.b16 %v6717, %v6714
  %v7552 = vpack.c.b16 %v6721, %v6718
  %v7553 = vpack.c.b16 %v6722, %v6719
  %v7554 = vpack.c.b16 %v6723, %v6720
  %v7555 = vpack.c.b16 %v6727, %v6724
  %v7556 = vpack.c.b16 %v6728, %v6725
  %v7557 = vpack.c.b16 %v6729, %v6726
  %v7558 = vpack.c.b16 %v6733, %v6730
  %v7559 = vpack.c.b16 %v6734, %v6731
  %v7560 = vpack.c.b16 %v6735, %v6732
  %v7561 = vpack.c.b16 %v6739, %v6736
  %v7562 = vpack.c.b16 %v6740, %v6737
  %v7563 = vpack.c.b16 %v6741, %v6738
  %v7564 = vpack.c.b16 %v6745, %v6742
  %v7565 = vpack.c.b16 %v6746, %v6743
  %v7566 = vpack.c.b16 %v6747, %v6744
  %v7567 = vpack.c.b16 %v6751, %v6748
  %v7568 = vpack.c.b16 %v6752, %v6749
  %v7569 = vpack.c.b16 %v6753, %v6750
  %v7570 = vpack.c.b16 %v6757, %v6754
  %v7571 = vpack.c.b16 %v6758, %v6755
  %v7572 = vpack.c.b16 %v6759, %v6756
  %v7573 = vpack.c.b16 %v6763, %v6760
  %v7574 = vpack.c.b16 %v6764, %v6761
  %v7575 = vpack.c.b16 %v6765, %v6762
  %v7576 = vpack.c.b16 %v6769, %v6766
  %v7577 = vpack.c.b16 %v6770, %v6767
  %v7578 = vpack.c.b16 %v6771, %v6768
  %v7579 = vpack.c.b16 %v6775, %v6772
  %v7580 = vpack.c.b16 %v6776, %v6773
  %v7581 = vpack.c.b16 %v6777, %v6774
  %v7582 = vpack.c.b16 %v6781, %v6778
  %v7583 = vpack.c.b16 %v6782, %v6779
  %v7584 = vpack.c.b16 %v6783, %v6780
  %v7585 = vpack.c.b16 %v6787, %v6784
  %v7586 = vpack.c.b16 %v6788, %v6785
  %v7587 = vpack.c.b16 %v6789, %v6786
  %v7588 = vpack.c.b16 %v6793, %v6790
  %v7589 = vpack.c.b16 %v6794, %v6791
  %v7590 = vpack.c.b16 %v6795, %v6792
  %v7591 = vpack.c.b16 %v6799, %v6796
  %v7592 = vpack.c.b16 %v6800, %v6797
  %v7593 = vpack.c.b16 %v6801, %v6798
  %v7594 = vpack.c.b16 %v6805, %v6802
  %v7595 = vpack.c.b16 %v6806, %v6803
  %v7596 = vpack.c.b16 %v6807, %v6804
  %v7597 = vpack.c.b16 %v6811, %v6808
  %v7598 = vpack.c.b16 %v6812, %v6809
  %v7599 = vpack.c.b16 %v6813, %v6810
  %v7600 = vpack.c.b16 %v6817, %v6814
  %v7601 = vpack.c.b16 %v6818, %v6815
  %v7602 = vpack.c.b16 %v6819, %v6816
  %v7603 = vpack.c.b16 %v6823, %v6820
  %v7604 = vpack.c.b16 %v6824, %v6821
  %v7605 = vpack.c.b16 %v6825, %v6822
  %v7606 = vpack.c.b16 %v6829, %v6826
  %v7607 = vpack.c.b16 %v6830, %v6827
  %v7608 = vpack.c.b16 %v6831, %v6828
  %v7609 = vpack.c.b16 %v6835, %v6832
  %v7610 = vpack.c.b16 %v6836, %v6833
  %v7611 = vpack.c.b16 %v6837, %v6834
  %v7612 = vpack.c.b16 %v6841, %v6838
  %v7613 = vpack.c.b16 %v6842, %v6839
  %v7614 = vpack.c.b16 %v6843, %v6840
  %v7615 = vpack.c.b16 %v6847, %v6844
  %v7616 = vpack.c.b16 %v6848, %v6845
  %v7617 = vpack.c.b16 %v6849, %v6846
  %v7618 = vpack.c.b16 %v6853, %v6850
  %v7619 = vpack.c.b16 %v6854, %v6851
  %v7620 = vpack.c.b16 %v6855, %v6852
  %v7621 = vpack.c.b16 %v6859, %v6856
  %v7622 = vpack.c.b16 %v6860, %v6857
  %v7623 = vpack.c.b16 %v6861, %v6858
  %v7624 = vpack.c.b16 %v6865, %v6862
  %v7625 = vpack.c.b16 %v6866, %v6863
  %v7626 = vpack.c.b16 %v6867, %v6864
  %v7627 = vpack.c.b16 %v6871, %v6868
  %v7628 = vpack.c.b16 %v6872, %v6869
  %v7629 = vpack.c.b16 %v6873, %v6870
  %v7630 = vpack.c.b16 %v6877, %v6874
  %v7631 = vpack.c.b16 %v6878, %v6875
  %v7632 = vpack.c.b16 %v6879, %v6876
  %v7633 = vpack.c.b16 %v6883, %v6880
  %v7634 = vpack.c.b16 %v6884, %v6881
  %v7635 = vpack.c.b16 %v6885, %v6882
  %v7636 = vpack.c.b16 %v6889, %v6886
  %v7637 = vpack.c.b16 %v6890, %v6887
  %v7638 = vpack.c.b16 %v6891, %v6888
  %v7639 = vpack.c.b16 %v6895, %v6892
  %v7640 = vpack.c.b16 %v6896, %v6893
  %v7641 = vpack.c.b16 %v6897, %v6894
  %v7642 = vpack.c.b16 %v6901, %v6898
  %v7643 = vpack.c.b16 %v6902, %v6899
  %v7644 = vpack.c.b16 %v6903, %v6900
  %v7645 = vpack.c.b16 %v6907, %v6904
  %v7646 = vpack.c.b16 %v6908, %v6905
  %v7647 = vpack.c.b16 %v6909, %v6906
  %v7648 = vpack.c.b16 %v6913, %v6910
  %v7649 = vpack.c.b16 %v6914, %v6911
  %v7650 = vpack.c.b16 %v6915, %v6912
  %v7651 = vpack.c.b16 %v6919, %v6916
  %v7652 = vpack.c.b16 %v6920, %v6917
  %v7653 = vpack.c.b16 %v6921, %v6918
  %v7654 = vpack.c.b16 %v6925, %v6922
  %v7655 = vpack.c.b16 %v6926, %v6923
  %v7656 = vpack.c.b16 %v6927, %v6924
  %v7657 = vpack.c.b16 %v6931, %v6928
  %v7658 = vpack.c.b16 %v6932, %v6929
  %v7659 = vpack.c.b16 %v6933, %v6930
  %v7660 = vpack.c.b16 %v6937, %v6934
  %v7661 = vpack.c.b16 %v6938, %v6935
  %v7662 = vpack.c.b16 %v6939, %v6936
  %v7663 = vpack.c.b16 %v6943, %v6940
  %v7664 = vpack.c.b16 %v6944, %v6941
  %v7665 = vpack.c.b16 %v6945, %v6942
  %v7666 = vpack.c.b16 %v6949, %v6946
  %v7667 = vpack.c.b16 %v6950, %v6947
  %v7668 = vpack.c.b16 %v6951, %v6948
  %v7669 = vpack.c.b16 %v6955, %v6952
  %v7670 = vpack.c.b16 %v6956, %v6953
  %v7671 = vpack.c.b16 %v6957, %v6954
  %v7672 = vpack.c.b16 %v6961, %v6958
  %v7673 = vpack.c.b16 %v6962, %v6959
  %v7674 = vpack.c.b16 %v6963, %v6960
  %v7675 = vpack.c.b16 %v6967, %v6964
  %v7676 = vpack.c.b16 %v6968, %v6965
  %v7677 = vpack.c.b16 %v6969, %v6966
  %v7678 = vpack.c.b16 %v6973, %v6970
  %v7679 = vpack.c.b16 %v6974, %v6971
  %v7680 = vpack.c.b16 %v6975, %v6972
  %v7681 = vpack.c.b16 %v6979, %v6976
  %v7682 = vpack.c.b16 %v6980, %v6977
  %v7683 = vpack.c.b16 %v6981, %v6978
  %v7684 = vpack.c.b16 %v6985, %v6982
  %v7685 = vpack.c.b16 %v6986, %v6983
  %v7686 = vpack.c.b16 %v6987, %v6984
  %v7687 = vpack.c.b16 %v6991, %v6988
  %v7688 = vpack.c.b16 %v6992, %v6989
  %v7689 = vpack.c.b16 %v6993, %v6990
  %v7690 = vpack.c.b16 %v6997, %v6994
  %v7691 = vpack.c.b16 %v6998, %v6995
  %v7692 = vpack.c.b16 %v6999, %v6996
  %v7693 = vpack.c.b16 %v7003, %v7000
  %v7694 = vpack.c.b16 %v7004, %v7001
  %v7695 = vpack.c.b16 %v7005, %v7002
  %v7696 = vpack.c.b16 %v7009, %v7006
  %v7697 = vpack.c.b16 %v7010, %v7007
  %v7698 = vpack.c.b16 %v7011, %v7008
  %v7699 = vpack.c.b16 %v7015, %v7012
  %v7700 = vpack.c.b16 %v7016, %v7013
  %v7701 = vpack.c.b16 %v7017, %v7014
  %v7702 = vpack.c.b16 %v7021, %v7018
  %v7703 = vpack.c.b16 %v7022, %v7019
  %v7704 = vpack.c.b16 %v7023, %v7020
  %v7705 = vpack.c.b16 %v7027, %v7024
  %v7706 = vpack.c.b16 %v7028, %v7025
  %v7707 = vpack.c.b16 %v7029, %v7026
  %v7708 = vpack.c.b16 %v7033, %v7030
  %v7709 = vpack.c.b16 %v7034, %v7031
  %v7710 = vpack.c.b16 %v7035, %v7032
  %v7711 = vpack.c.b16 %v7039, %v7036
  %v7712 = vpack.c.b16 %v7040, %v7037
  %v7713 = vpack.c.b16 %v7041, %v7038
  %v7714 = vpack.c.b16 %v7045, %v7042
  %v7715 = vpack.c.b16 %v7046, %v7043
  %v7716 = vpack.c.b16 %v7047, %v7044
  %v7717 = vpack.c.b16 %v7051, %v7048
  %v7718 = vpack.c.b16 %v7052, %v7049
  %v7719 = vpack.c.b16 %v7053, %v7050
  %v7720 = vpack.c.b16 %v7057, %v7054
  %v7721 = vpack.c.b16 %v7058, %v7055
  %v7722 = vpack.c.b16 %v7059, %v7056
  %v7723 = vpack.c.b16 %v7063, %v7060
  %v7724 = vpack.c.b16 %v7064, %v7061
  %v7725 = vpack.c.b16 %v7065, %v7062
  %v7726 = vpack.c.b16 %v7069, %v7066
  %v7727 = vpack.c.b16 %v7070, %v7067
  %v7728 = vpack.c.b16 %v7071, %v7068
  %v7729 = vpack.c.b16 %v7075, %v7072
  %v7730 = vpack.c.b16 %v7076, %v7073
  %v7731 = vpack.c.b16 %v7077, %v7074
  %v7732 = vpack.c.b16 %v7081, %v7078
  %v7733 = vpack.c.b16 %v7082, %v7079
  %v7734 = vpack.c.b16 %v7083, %v7080
  %v7735 = vpack.c.b16 %v7087, %v7084
  %v7736 = vpack.c.b16 %v7088, %v7085
  %v7737 = vpack.c.b16 %v7089, %v7086
  %v7738 = vpack.c.b16 %v7093, %v7090
  %v7739 = vpack.c.b16 %v7094, %v7091
  %v7740 = vpack.c.b16 %v7095, %v7092
  %v7741 = vpack.c.b16 %v7099, %v7096
  %v7742 = vpack.c.b16 %v7100, %v7097
  %v7743 = vpack.c.b16 %v7101, %v7098
  %v7744 = vpack.c.b16 %v7105, %v7102
  %v7745 = vpack.c.b16 %v7106, %v7103
  %v7746 = vpack.c.b16 %v7107, %v7104
  %v7747 = vpack.c.b16 %v7111, %v7108
  %v7748 = vpack.c.b16 %v7112, %v7109
  %v7749 = vpack.c.b16 %v7113, %v7110
  %v7750 = vpack.c.b16 %v7117, %v7114
  %v7751 = vpack.c.b16 %v7118, %v7115
  %v7752 = vpack.c.b16 %v7119, %v7116
  %v7753 = vpack.c.b16 %v7123, %v7120
  %v7754 = vpack.c.b16 %v7124, %v7121
  %v7755 = vpack.c.b16 %v7125, %v7122
  %v7756 = vpack.c.b16 %v7129, %v7126
  %v7757 = vpack.c.b16 %v7130, %v7127
  %v7758 = vpack.c.b16 %v7131, %v7128
  %v7759 = vpack.c.b16 %v7135, %v7132
  %v7760 = vpack.c.b16 %v7136, %v7133
  %v7761 = vpack.c.b16 %v7137, %v7134
  %v7762 = vpack.c.b16 %v7141, %v7138
  %v7763 = vpack.c.b16 %v7142, %v7139
  %v7764 = vpack.c.b16 %v7143, %v7140
  %v7765 = vpack.c.b16 %v7147, %v7144
  %v7766 = vpack.c.b16 %v7148, %v7145
  %v7767 = vpack.c.b16 %v7149, %v7146
  %v7768 = vpack.c.b16 %v7153, %v7150
  %v7769 = vpack.c.b16 %v7154, %v7151
  %v7770 = vpack.c.b16 %v7155, %v7152
  %v7771 = vpack.c.b16 %v7159, %v7156
  %v7772 = vpack.c.b16 %v7160, %v7157
  %v7773 = vpack.c.b16 %v7161, %v7158
  %v7774 = vpack.c.b16 %v7165, %v7162
  %v7775 = vpack.c.b16 %v7166, %v7163
  %v7776 = vpack.c.b16 %v7167, %v7164
  %v7777 = vpack.c.b16 %v7171, %v7168
  %v7778 = vpack.c.b16 %v7172, %v7169
  %v7779 = vpack.c.b16 %v7173, %v7170
  %v7780 = vpack.c.b16 %v7177, %v7174
  %v7781 = vpack.c.b16 %v7178, %v7175
  %v7782 = vpack.c.b16 %v7179, %v7176
  %v7783 = vpack.c.b16 %v7183, %v7180
  %v7784 = vpack.c.b16 %v7184, %v7181
  %v7785 = vpack.c.b16 %v7185, %v7182
  %v7786 = vpack.c.b16 %v7189, %v7186
  %v7787 = vpack.c.b16 %v7190, %v7187
  %v7788 = vpack.c.b16 %v7191, %v7188
  %v7789 = vpack.c.b16 %v7195, %v7192
  %v7790 = vpack.c.b16 %v7196, %v7193
  %v7791 = vpack.c.b16 %v7197, %v7194
  %v7792 = vpack.c.b16 %v7201, %v7198
  %v7793 = vpack.c.b16 %v7202, %v7199
  %v7794 = vpack.c.b16 %v7203, %v7200
  %v7795 = vpack.c.b16 %v7207, %v7204
  %v7796 = vpack.c.b16 %v7208, %v7205
  %v7797 = vpack.c.b16 %v7209, %v7206
  %v7798 = vpack.c.b16 %v7213, %v7210
  %v7799 = vpack.c.b16 %v7214, %v7211
  %v7800 = vpack.c.b16 %v7215, %v7212
  %v7801 = vpack.c.b16 %v7219, %v7216
  %v7802 = vpack.c.b16 %v7220, %v7217
  %v7803 = vpack.c.b16 %v7221, %v7218
  %v7804 = vpack.c.b16 %v7225, %v7222
  %v7805 = vpack.c.b16 %v7226, %v7223
  %v7806 = vpack.c.b16 %v7227, %v7224
  %v7807 = vpack.c.b16 %v7231, %v7228
  %v7808 = vpack.c.b16 %v7232, %v7229
  %v7809 = vpack.c.b16 %v7233, %v7230
  %v7810 = vpack.c.b16 %v7237, %v7234
  %v7811 = vpack.c.b16 %v7238, %v7235
  %v7812 = vpack.c.b16 %v7239, %v7236
  %v7813 = vpack.c.b16 %v7243, %v7240
  %v7814 = vpack.c.b16 %v7244, %v7241
  %v7815 = vpack.c.b16 %v7245, %v7242
  %v7816 = vpack.c.b16 %v7249, %v7246
  %v7817 = vpack.c.b16 %v7250, %v7247
  %v7818 = vpack.c.b16 %v7251, %v7248
  %v7819 = vpack.c.b16 %v7255, %v7252
  %v7820 = vpack.c.b16 %v7256, %v7253
  %v7821 = vpack.c.b16 %v7257, %v7254
  %v7822 = vpack.c.b16 %v7261, %v7258
  %v7823 = vpack.c.b16 %v7262, %v7259
  %v7824 = vpack.c.b16 %v7263, %v7260
  %v7825 = vpack.c.b16 %v7267, %v7264
  %v7826 = vpack.c.b16 %v7268, %v7265
  %v7827 = vpack.c.b16 %v7269, %v7266
  %v7828 = vpack.c.b16 %v7273, %v7270
  %v7829 = vpack.c.b16 %v7274, %v7271
  %v7830 = vpack.c.b16 %v7275, %v7272
  %v7831 = vpack.c.b16 %v7279, %v7276
  %v7832 = vpack.c.b16 %v7280, %v7277
  %v7833 = vpack.c.b16 %v7281, %v7278
  %v7834 = vpack.c.b16 %v7285, %v7282
  %v7835 = vpack.c.b16 %v7286, %v7283
  %v7836 = vpack.c.b16 %v7287, %v7284
  %v7837 = vpack.c.b16 %v7291, %v7288
  %v7838 = vpack.c.b16 %v7292, %v7289
  %v7839 = vpack.c.b16 %v7293, %v7290
  %v7840 = vpack.c.b16 %v7297, %v7294
  %v7841 = vpack.c.b16 %v7298, %v7295
  %v7842 = vpack.c.b16 %v7299, %v7296
  %v7843 = vpack.c.b16 %v7303, %v7300
  %v7844 = vpack.c.b16 %v7304, %v7301
  %v7845 = vpack.c.b16 %v7305, %v7302
  %v7846 = vpack.c.b16 %v7309, %v7306
  %v7847 = vpack.c.b16 %v7310, %v7307
  %v7848 = vpack.c.b16 %v7311, %v7308
  %v7849 = vpack.c.b16 %v7315, %v7312
  %v7850 = vpack.c.b16 %v7316, %v7313
  %v7851 = vpack.c.b16 %v7317, %v7314
  %v7852 = vpack.c.b16 %v7321, %v7318
  %v7853 = vpack.c.b16 %v7322, %v7319
  %v7854 = vpack.c.b16 %v7323, %v7320
  %v7855 = vpack.c.b16 %v7327, %v7324
  %v7856 = vpack.c.b16 %v7328, %v7325
  %v7857 = vpack.c.b16 %v7329, %v7326
  %v7858 = vpack.c.b16 %v7333, %v7330
  %v7859 = vpack.c.b16 %v7334, %v7331
  %v7860 = vpack.c.b16 %v7335, %v7332
  %v7861 = vpack.c.b16 %v7339, %v7336
  %v7862 = vpack.c.b16 %v7340, %v7337
  %v7863 = vpack.c.b16 %v7341, %v7338
  %v7864 = vpack.c.b16 %v7345, %v7342
  %v7865 = vpack.c.b16 %v7346, %v7343
  %v7866 = vpack.c.b16 %v7347, %v7344
  %v7867 = vpack.c.b16 %v7351, %v7348
  %v7868 = vpack.c.b16 %v7352, %v7349
  %v7869 = vpack.c.b16 %v7353, %v7350
  %v7870 = vpack.c.b16 %v7357, %v7354
  %v7871 = vpack.c.b16 %v7358, %v7355
  %v7872 = vpack.c.b16 %v7359, %v7356
  %v7873 = vpack.c.b16 %v7363, %v7360
  %v7874 = vpack.c.b16 %v7364, %v7361
  %v7875 = vpack.c.b16 %v7365, %v7362
  %v7876 = vpack.c.b16 %v7369, %v7366
  %v7877 = vpack.c.b16 %v7370, %v7367
  %v7878 = vpack.c.b16 %v7371, %v7368
  %v7879 = vpack.c.b16 %v7375, %v7372
  %v7880 = vpack.c.b16 %v7376, %v7373
  %v7881 = vpack.c.b16 %v7377, %v7374
  %v7882 = vpack.c.b16 %v7381, %v7378
  %v7883 = vpack.c.b16 %v7382, %v7379
  %v7884 = vpack.c.b16 %v7383, %v7380
  %v7885 = vpack.c.b16 %v7387, %v7384
  %v7886 = vpack.c.b16 %v7388, %v7385
  %v7887 = vpack.c.b16 %v7389, %v7386
  %v7888 = vpack.c.b16 %v7393, %v7390
  %v7889 = vpack.c.b16 %v7394, %v7391
  %v7890 = vpack.c.b16 %v7395, %v7392
  %v7891 = vpack.c.b16 %v7399, %v7396
  %v7892 = vpack.c.b16 %v7400, %v7397
  %v7893 = vpack.c.b16 %v7401, %v7398
  %v7894 = vpack.c.b16 %v7405, %v7402
  %v7895 = vpack.c.b16 %v7406, %v7403
  %v7896 = vpack.c.b16 %v7407, %v7404
  %v7897 = vpack.c.b16 %v7411, %v7408
  %v7898 = vpack.c.b16 %v7412, %v7409
  %v7899 = vpack.c.b16 %v7413, %v7410
  %v7900 = vpack.c.b16 %v7417, %v7414
  %v7901 = vpack.c.b16 %v7418, %v7415
  %v7902 = vpack.c.b16 %v7419, %v7416
  %v7903 = vpack.c.b16 %v7423, %v7420
  %v7904 = vpack.c.b16 %v7424, %v7421
  %v7905 = vpack.c.b16 %v7425, %v7422
  %v7906 = vpack.c.b16 %v7429, %v7426
  %v7907 = vpack.c.b16 %v7430, %v7427
  %v7908 = vpack.c.b16 %v7431, %v7428
  %v7909 = vpack.c.b16 %v7435, %v7432
  %v7910 = vpack.c.b16 %v7436, %v7433
  %v7911 = vpack.c.b16 %v7437, %v7434
  %v7912 = vpack.c.b16 %v7441, %v7438
  %v7913 = vpack.c.b16 %v7442, %v7439
  %v7914 = vpack.c.b16 %v7443, %v7440
  %v7915 = vpack.c.b16 %v7447, %v7444
  %v7916 = vpack.c.b16 %v7448, %v7445
  %v7917 = vpack.c.b16 %v7449, %v7446
  %v7918 = vpack.c.b16 %v7453, %v7450
  %v7919 = vpack.c.b16 %v7454, %v7451
  %v7920 = vpack.c.b16 %v7455, %v7452
  %v7921 = vpack.c.b16 %v7459, %v7456
  %v7922 = vpack.c.b16 %v7460, %v7457
  %v7923 = vpack.c.b16 %v7461, %v7458
  %v7924 = vpack.c.b16 %v7465, %v7462
  %v7925 = vpack.c.b16 %v7466, %v7463
  %v7926 = vpack.c.b16 %v7467, %v7464
  %v7927 = vpack.c.b16 %v7471, %v7468
  %v7928 = vpack.c.b16 %v7472, %v7469
  %v7929 = vpack.c.b16 %v7473, %v7470
  %v7930 = vpack.c.b16 %v7477, %v7474
  %v7931 = vpack.c.b16 %v7478, %v7475
  %v7932 = vpack.c.b16 %v7479, %v7476
  %v7933 = vpack.c.b16 %v7483, %v7480
  %v7934 = vpack.c.b16 %v7484, %v7481
  %v7935 = vpack.c.b16 %v7485, %v7482
  %v7936 = vpack.c.b16 %v7489, %v7486
  %v7937 = vpack.c.b16 %v7490, %v7487
  %v7938 = vpack.c.b16 %v7491, %v7488
  %v7939 = vpack.c.b16 %v7495, %v7492
  %v7940 = vpack.c.b16 %v7496, %v7493
  %v7941 = vpack.c.b16 %v7497, %v7494
  %v7942 = vpack.c.b16 %v7501, %v7498
  %v7943 = vpack.c.b16 %v7502, %v7499
  %v7944 = vpack.c.b16 %v7503, %v7500
  %v7945 = vpack.c.b16 %v7507, %v7504
  %v7946 = vpack.c.b16 %v7508, %v7505
  %v7947 = vpack.c.b16 %v7509, %v7506
  %v7948 = vpack.c.b16 %v7513, %v7510
  %v7949 = vpack.c.b16 %v7514, %v7511
  %v7950 = vpack.c.b16 %v7515, %v7512
  %v7951 = vpack.c.b16 %v7519, %v7516
  %v7952 = vpack.c.b16 %v7520, %v7517
  %v7953 = vpack.c.b16 %v7521, %v7518
  %8386 = vmatpush.bf16.msra.mxu0 %v7543
  %8387 = vmatpush.bf16.msra.mxu0 %v7540
  %8388 = vmatpush.bf16.msra.mxu0 %v7537
  %8389 = vmatpush.bf16.msra.mxu0 %v7534
  %8390 = vmatpush.bf16.msra.mxu0 %v7531
  %8391 = vmatpush.bf16.msra.mxu0 %v7528
  %8392 = vmatpush.bf16.msra.mxu0 %v7525
  %8393 = vmatpush.bf16.msra.mxu0 %v7522
  %8394 = vmatmul.bf16.gmra.mxu0 %v6010
  %v8395 = vpop.f32.mrf.mxu0
  %v8396 = vadd.f32 0.0, %v8395
  %v8397 = vpop.f32.mrf.mxu0
  %v8398 = vadd.f32 0.0, %v8397
  %8399 = vmatmul.bf16.gmra.mxu0 %v6028
  %v8400 = vpop.f32.mrf.mxu0
  %v8401 = vadd.f32 0.0, %v8400
  %v8402 = vpop.f32.mrf.mxu0
  %v8403 = vadd.f32 0.0, %v8402
  %8404 = vdwg.mxu0
  %8405 = vmatpush.bf16.msra.mxu0 %v7567
  %8406 = vmatpush.bf16.msra.mxu0 %v7564
  %8407 = vmatpush.bf16.msra.mxu0 %v7561
  %8408 = vmatpush.bf16.msra.mxu0 %v7558
  %8409 = vmatpush.bf16.msra.mxu0 %v7555
  %8410 = vmatpush.bf16.msra.mxu0 %v7552
  %8411 = vmatpush.bf16.msra.mxu0 %v7549
  %8412 = vmatpush.bf16.msra.mxu0 %v7546
  %8413 = vmatmul.bf16.gmra.mxu0 %v6011
  %v8414 = vpop.f32.mrf.mxu0
  %v8415 = vadd.f32 %v8396, %v8414
  %v8416 = vpop.f32.mrf.mxu0
  %v8417 = vadd.f32 %v8398, %v8416
  %8418 = vmatmul.bf16.gmra.mxu0 %v6029
  %v8419 = vpop.f32.mrf.mxu0
  %v8420 = vadd.f32 %v8401, %v8419
  %v8421 = vpop.f32.mrf.mxu0
  %v8422 = vadd.f32 %v8403, %v8421
  %8423 = vdwg.mxu0
  %8424 = vmatpush.bf16.msra.mxu0 %v7591
  %8425 = vmatpush.bf16.msra.mxu0 %v7588
  %8426 = vmatpush.bf16.msra.mxu0 %v7585
  %8427 = vmatpush.bf16.msra.mxu0 %v7582
  %8428 = vmatpush.bf16.msra.mxu0 %v7579
  %8429 = vmatpush.bf16.msra.mxu0 %v7576
  %8430 = vmatpush.bf16.msra.mxu0 %v7573
  %8431 = vmatpush.bf16.msra.mxu0 %v7570
  %8432 = vmatmul.bf16.gmra.mxu0 %v6012
  %v8433 = vpop.f32.mrf.mxu0
  %v8434 = vadd.f32 %v8415, %v8433
  %v8435 = vpop.f32.mrf.mxu0
  %v8436 = vadd.f32 %v8417, %v8435
  %8437 = vmatmul.bf16.gmra.mxu0 %v6030
  %v8438 = vpop.f32.mrf.mxu0
  %v8439 = vadd.f32 %v8420, %v8438
  %v8440 = vpop.f32.mrf.mxu0
  %v8441 = vadd.f32 %v8422, %v8440
  %8442 = vdwg.mxu0
  %8443 = vmatpush.bf16.msra.mxu0 %v7615
  %8444 = vmatpush.bf16.msra.mxu0 %v7612
  %8445 = vmatpush.bf16.msra.mxu0 %v7609
  %8446 = vmatpush.bf16.msra.mxu0 %v7606
  %8447 = vmatpush.bf16.msra.mxu0 %v7603
  %8448 = vmatpush.bf16.msra.mxu0 %v7600
  %8449 = vmatpush.bf16.msra.mxu0 %v7597
  %8450 = vmatpush.bf16.msra.mxu0 %v7594
  %8451 = vmatmul.bf16.gmra.mxu0 %v6013
  %v8452 = vpop.f32.mrf.mxu0
  %v8453 = vadd.f32 %v8434, %v8452
  %v8454 = vpop.f32.mrf.mxu0
  %v8455 = vadd.f32 %v8436, %v8454
  %8456 = vmatmul.bf16.gmra.mxu0 %v6031
  %v8457 = vpop.f32.mrf.mxu0
  %v8458 = vadd.f32 %v8439, %v8457
  %v8459 = vpop.f32.mrf.mxu0
  %v8460 = vadd.f32 %v8441, %v8459
  %8461 = vdwg.mxu0
  %8462 = vmatpush.bf16.msra.mxu0 %v7639
  %8463 = vmatpush.bf16.msra.mxu0 %v7636
  %8464 = vmatpush.bf16.msra.mxu0 %v7633
  %8465 = vmatpush.bf16.msra.mxu0 %v7630
  %8466 = vmatpush.bf16.msra.mxu0 %v7627
  %8467 = vmatpush.bf16.msra.mxu0 %v7624
  %8468 = vmatpush.bf16.msra.mxu0 %v7621
  %8469 = vmatpush.bf16.msra.mxu0 %v7618
  %8470 = vmatmul.bf16.gmra.mxu0 %v6014
  %v8471 = vpop.f32.mrf.mxu0
  %v8472 = vadd.f32 %v8453, %v8471
  %v8473 = vpop.f32.mrf.mxu0
  %v8474 = vadd.f32 %v8455, %v8473
  %8475 = vmatmul.bf16.gmra.mxu0 %v6032
  %v8476 = vpop.f32.mrf.mxu0
  %v8477 = vadd.f32 %v8458, %v8476
  %v8478 = vpop.f32.mrf.mxu0
  %v8479 = vadd.f32 %v8460, %v8478
  %8480 = vdwg.mxu0
  %8481 = vmatpush.bf16.msra.mxu0 %v7663
  %8482 = vmatpush.bf16.msra.mxu0 %v7660
  %8483 = vmatpush.bf16.msra.mxu0 %v7657
  %8484 = vmatpush.bf16.msra.mxu0 %v7654
  %8485 = vmatpush.bf16.msra.mxu0 %v7651
  %8486 = vmatpush.bf16.msra.mxu0 %v7648
  %8487 = vmatpush.bf16.msra.mxu0 %v7645
  %8488 = vmatpush.bf16.msra.mxu0 %v7642
  %8489 = vmatmul.bf16.gmra.mxu0 %v6015
  %v8490 = vpop.f32.mrf.mxu0
  %v8491 = vadd.f32 %v8472, %v8490
  %v8492 = vpop.f32.mrf.mxu0
  %v8493 = vadd.f32 %v8474, %v8492
  %8494 = vmatmul.bf16.gmra.mxu0 %v6033
  %v8495 = vpop.f32.mrf.mxu0
  %v8496 = vadd.f32 %v8477, %v8495
  %v8497 = vpop.f32.mrf.mxu0
  %v8498 = vadd.f32 %v8479, %v8497
  %8499 = vdwg.mxu0
  %8500 = vmatpush.bf16.msra.mxu0 %v7687
  %8501 = vmatpush.bf16.msra.mxu0 %v7684
  %8502 = vmatpush.bf16.msra.mxu0 %v7681
  %8503 = vmatpush.bf16.msra.mxu0 %v7678
  %8504 = vmatpush.bf16.msra.mxu0 %v7675
  %8505 = vmatpush.bf16.msra.mxu0 %v7672
  %8506 = vmatpush.bf16.msra.mxu0 %v7669
  %8507 = vmatpush.bf16.msra.mxu0 %v7666
  %8508 = vmatmul.bf16.gmra.mxu0 %v6016
  %v8509 = vpop.f32.mrf.mxu0
  %v8510 = vadd.f32 %v8491, %v8509
  %v8511 = vpop.f32.mrf.mxu0
  %v8512 = vadd.f32 %v8493, %v8511
  %8513 = vmatmul.bf16.gmra.mxu0 %v6034
  %v8514 = vpop.f32.mrf.mxu0
  %v8515 = vadd.f32 %v8496, %v8514
  %v8516 = vpop.f32.mrf.mxu0
  %v8517 = vadd.f32 %v8498, %v8516
  %8518 = vdwg.mxu0
  %8519 = vmatpush.bf16.msra.mxu0 %v7711
  %8520 = vmatpush.bf16.msra.mxu0 %v7708
  %8521 = vmatpush.bf16.msra.mxu0 %v7705
  %8522 = vmatpush.bf16.msra.mxu0 %v7702
  %8523 = vmatpush.bf16.msra.mxu0 %v7699
  %8524 = vmatpush.bf16.msra.mxu0 %v7696
  %8525 = vmatpush.bf16.msra.mxu0 %v7693
  %8526 = vmatpush.bf16.msra.mxu0 %v7690
  %8527 = vmatmul.bf16.gmra.mxu0 %v6017
  %v8528 = vpop.f32.mrf.mxu0
  %v8529 = vadd.f32 %v8510, %v8528
  %v8530 = vpop.f32.mrf.mxu0
  %v8531 = vadd.f32 %v8512, %v8530
  %8532 = vmatmul.bf16.gmra.mxu0 %v6035
  %v8533 = vpop.f32.mrf.mxu0
  %v8534 = vadd.f32 %v8515, %v8533
  %v8535 = vpop.f32.mrf.mxu0
  %v8536 = vadd.f32 %v8517, %v8535
  %8537 = vdwg.mxu0
  %8538 = vmatpush.bf16.msra.mxu0 %v7735
  %8539 = vmatpush.bf16.msra.mxu0 %v7732
  %8540 = vmatpush.bf16.msra.mxu0 %v7729
  %8541 = vmatpush.bf16.msra.mxu0 %v7726
  %8542 = vmatpush.bf16.msra.mxu0 %v7723
  %8543 = vmatpush.bf16.msra.mxu0 %v7720
  %8544 = vmatpush.bf16.msra.mxu0 %v7717
  %8545 = vmatpush.bf16.msra.mxu0 %v7714
  %8546 = vmatmul.bf16.gmra.mxu0 %v6018
  %v8547 = vpop.f32.mrf.mxu0
  %v8548 = vadd.f32 %v8529, %v8547
  %v8549 = vpop.f32.mrf.mxu0
  %v8550 = vadd.f32 %v8531, %v8549
  %8551 = vmatmul.bf16.gmra.mxu0 %v6036
  %v8552 = vpop.f32.mrf.mxu0
  %v8553 = vadd.f32 %v8534, %v8552
  %v8554 = vpop.f32.mrf.mxu0
  %v8555 = vadd.f32 %v8536, %v8554
  %8556 = vdwg.mxu0
  %8557 = vmatpush.bf16.msra.mxu0 %v7759
  %8558 = vmatpush.bf16.msra.mxu0 %v7756
  %8559 = vmatpush.bf16.msra.mxu0 %v7753
  %8560 = vmatpush.bf16.msra.mxu0 %v7750
  %8561 = vmatpush.bf16.msra.mxu0 %v7747
  %8562 = vmatpush.bf16.msra.mxu0 %v7744
  %8563 = vmatpush.bf16.msra.mxu0 %v7741
  %8564 = vmatpush.bf16.msra.mxu0 %v7738
  %8565 = vmatmul.bf16.gmra.mxu0 %v6019
  %v8566 = vpop.f32.mrf.mxu0
  %v8567 = vadd.f32 %v8548, %v8566
  %v8568 = vpop.f32.mrf.mxu0
  %v8569 = vadd.f32 %v8550, %v8568
  %8570 = vmatmul.bf16.gmra.mxu0 %v6037
  %v8571 = vpop.f32.mrf.mxu0
  %v8572 = vadd.f32 %v8553, %v8571
  %v8573 = vpop.f32.mrf.mxu0
  %v8574 = vadd.f32 %v8555, %v8573
  %8575 = vdwg.mxu0
  %8576 = vmatpush.bf16.msra.mxu0 %v7783
  %8577 = vmatpush.bf16.msra.mxu0 %v7780
  %8578 = vmatpush.bf16.msra.mxu0 %v7777
  %8579 = vmatpush.bf16.msra.mxu0 %v7774
  %8580 = vmatpush.bf16.msra.mxu0 %v7771
  %8581 = vmatpush.bf16.msra.mxu0 %v7768
  %8582 = vmatpush.bf16.msra.mxu0 %v7765
  %8583 = vmatpush.bf16.msra.mxu0 %v7762
  %8584 = vmatmul.bf16.gmra.mxu0 %v6020
  %v8585 = vpop.f32.mrf.mxu0
  %v8586 = vadd.f32 %v8567, %v8585
  %v8587 = vpop.f32.mrf.mxu0
  %v8588 = vadd.f32 %v8569, %v8587
  %8589 = vmatmul.bf16.gmra.mxu0 %v6038
  %v8590 = vpop.f32.mrf.mxu0
  %v8591 = vadd.f32 %v8572, %v8590
  %v8592 = vpop.f32.mrf.mxu0
  %v8593 = vadd.f32 %v8574, %v8592
  %8594 = vdwg.mxu0
  %8595 = vmatpush.bf16.msra.mxu0 %v7807
  %8596 = vmatpush.bf16.msra.mxu0 %v7804
  %8597 = vmatpush.bf16.msra.mxu0 %v7801
  %8598 = vmatpush.bf16.msra.mxu0 %v7798
  %8599 = vmatpush.bf16.msra.mxu0 %v7795
  %8600 = vmatpush.bf16.msra.mxu0 %v7792
  %8601 = vmatpush.bf16.msra.mxu0 %v7789
  %8602 = vmatpush.bf16.msra.mxu0 %v7786
  %8603 = vmatmul.bf16.gmra.mxu0 %v6021
  %v8604 = vpop.f32.mrf.mxu0
  %v8605 = vadd.f32 %v8586, %v8604
  %v8606 = vpop.f32.mrf.mxu0
  %v8607 = vadd.f32 %v8588, %v8606
  %8608 = vmatmul.bf16.gmra.mxu0 %v6039
  %v8609 = vpop.f32.mrf.mxu0
  %v8610 = vadd.f32 %v8591, %v8609
  %v8611 = vpop.f32.mrf.mxu0
  %v8612 = vadd.f32 %v8593, %v8611
  %8613 = vdwg.mxu0
  %8614 = vmatpush.bf16.msra.mxu0 %v7831
  %8615 = vmatpush.bf16.msra.mxu0 %v7828
  %8616 = vmatpush.bf16.msra.mxu0 %v7825
  %8617 = vmatpush.bf16.msra.mxu0 %v7822
  %8618 = vmatpush.bf16.msra.mxu0 %v7819
  %8619 = vmatpush.bf16.msra.mxu0 %v7816
  %8620 = vmatpush.bf16.msra.mxu0 %v7813
  %8621 = vmatpush.bf16.msra.mxu0 %v7810
  %8622 = vmatmul.bf16.gmra.mxu0 %v6022
  %v8623 = vpop.f32.mrf.mxu0
  %v8624 = vadd.f32 %v8605, %v8623
  %v8625 = vpop.f32.mrf.mxu0
  %v8626 = vadd.f32 %v8607, %v8625
  %8627 = vmatmul.bf16.gmra.mxu0 %v6040
  %v8628 = vpop.f32.mrf.mxu0
  %v8629 = vadd.f32 %v8610, %v8628
  %v8630 = vpop.f32.mrf.mxu0
  %v8631 = vadd.f32 %v8612, %v8630
  %8632 = vdwg.mxu0
  %8633 = vmatpush.bf16.msra.mxu0 %v7855
  %8634 = vmatpush.bf16.msra.mxu0 %v7852
  %8635 = vmatpush.bf16.msra.mxu0 %v7849
  %8636 = vmatpush.bf16.msra.mxu0 %v7846
  %8637 = vmatpush.bf16.msra.mxu0 %v7843
  %8638 = vmatpush.bf16.msra.mxu0 %v7840
  %8639 = vmatpush.bf16.msra.mxu0 %v7837
  %8640 = vmatpush.bf16.msra.mxu0 %v7834
  %8641 = vmatmul.bf16.gmra.mxu0 %v6023
  %v8642 = vpop.f32.mrf.mxu0
  %v8643 = vadd.f32 %v8624, %v8642
  %v8644 = vpop.f32.mrf.mxu0
  %v8645 = vadd.f32 %v8626, %v8644
  %8646 = vmatmul.bf16.gmra.mxu0 %v6041
  %v8647 = vpop.f32.mrf.mxu0
  %v8648 = vadd.f32 %v8629, %v8647
  %v8649 = vpop.f32.mrf.mxu0
  %v8650 = vadd.f32 %v8631, %v8649
  %8651 = vdwg.mxu0
  %8652 = vmatpush.bf16.msra.mxu0 %v7879
  %8653 = vmatpush.bf16.msra.mxu0 %v7876
  %8654 = vmatpush.bf16.msra.mxu0 %v7873
  %8655 = vmatpush.bf16.msra.mxu0 %v7870
  %8656 = vmatpush.bf16.msra.mxu0 %v7867
  %8657 = vmatpush.bf16.msra.mxu0 %v7864
  %8658 = vmatpush.bf16.msra.mxu0 %v7861
  %8659 = vmatpush.bf16.msra.mxu0 %v7858
  %8660 = vmatmul.bf16.gmra.mxu0 %v6024
  %v8661 = vpop.f32.mrf.mxu0
  %v8662 = vadd.f32 %v8643, %v8661
  %v8663 = vpop.f32.mrf.mxu0
  %v8664 = vadd.f32 %v8645, %v8663
  %8665 = vmatmul.bf16.gmra.mxu0 %v6042
  %v8666 = vpop.f32.mrf.mxu0
  %v8667 = vadd.f32 %v8648, %v8666
  %v8668 = vpop.f32.mrf.mxu0
  %v8669 = vadd.f32 %v8650, %v8668
  %8670 = vdwg.mxu0
  %8671 = vmatpush.bf16.msra.mxu0 %v7903
  %8672 = vmatpush.bf16.msra.mxu0 %v7900
  %8673 = vmatpush.bf16.msra.mxu0 %v7897
  %8674 = vmatpush.bf16.msra.mxu0 %v7894
  %8675 = vmatpush.bf16.msra.mxu0 %v7891
  %8676 = vmatpush.bf16.msra.mxu0 %v7888
  %8677 = vmatpush.bf16.msra.mxu0 %v7885
  %8678 = vmatpush.bf16.msra.mxu0 %v7882
  %8679 = vmatmul.bf16.gmra.mxu0 %v6025
  %v8680 = vpop.f32.mrf.mxu0
  %v8681 = vadd.f32 %v8662, %v8680
  %v8682 = vpop.f32.mrf.mxu0
  %v8683 = vadd.f32 %v8664, %v8682
  %8684 = vmatmul.bf16.gmra.mxu0 %v6043
  %v8685 = vpop.f32.mrf.mxu0
  %v8686 = vadd.f32 %v8667, %v8685
  %v8687 = vpop.f32.mrf.mxu0
  %v8688 = vadd.f32 %v8669, %v8687
  %8689 = vdwg.mxu0
  %8690 = vmatpush.bf16.msra.mxu0 %v7927
  %8691 = vmatpush.bf16.msra.mxu0 %v7924
  %8692 = vmatpush.bf16.msra.mxu0 %v7921
  %8693 = vmatpush.bf16.msra.mxu0 %v7918
  %8694 = vmatpush.bf16.msra.mxu0 %v7915
  %8695 = vmatpush.bf16.msra.mxu0 %v7912
  %8696 = vmatpush.bf16.msra.mxu0 %v7909
  %8697 = vmatpush.bf16.msra.mxu0 %v7906
  %8698 = vmatmul.bf16.gmra.mxu0 %v6026
  %v8699 = vpop.f32.mrf.mxu0
  %v8700 = vadd.f32 %v8681, %v8699
  %v8701 = vpop.f32.mrf.mxu0
  %v8702 = vadd.f32 %v8683, %v8701
  %8703 = vmatmul.bf16.gmra.mxu0 %v6044
  %v8704 = vpop.f32.mrf.mxu0
  %v8705 = vadd.f32 %v8686, %v8704
  %v8706 = vpop.f32.mrf.mxu0
  %v8707 = vadd.f32 %v8688, %v8706
  %8708 = vdwg.mxu0
  %8709 = vmatpush.bf16.msra.mxu0 %v7951
  %8710 = vmatpush.bf16.msra.mxu0 %v7948
  %8711 = vmatpush.bf16.msra.mxu0 %v7945
  %8712 = vmatpush.bf16.msra.mxu0 %v7942
  %8713 = vmatpush.bf16.msra.mxu0 %v7939
  %8714 = vmatpush.bf16.msra.mxu0 %v7936
  %8715 = vmatpush.bf16.msra.mxu0 %v7933
  %8716 = vmatpush.bf16.msra.mxu0 %v7930
  %8717 = vmatmul.bf16.gmra.mxu0 %v6027
  %v8718 = vpop.f32.mrf.mxu0
  %v8719 = vadd.f32 %v8700, %v8718
  %v8720 = vpop.f32.mrf.mxu0
  %v8721 = vadd.f32 %v8702, %v8720
  %8722 = vmatmul.bf16.gmra.mxu0 %v6045
  %v8723 = vpop.f32.mrf.mxu0
  %v8724 = vadd.f32 %v8705, %v8723
  %v8725 = vpop.f32.mrf.mxu0
  %v8726 = vadd.f32 %v8707, %v8725
  %8727 = vdwg.mxu0
  %8728 = vmatpush.bf16.msra.mxu0 %v7544
  %8729 = vmatpush.bf16.msra.mxu0 %v7541
  %8730 = vmatpush.bf16.msra.mxu0 %v7538
  %8731 = vmatpush.bf16.msra.mxu0 %v7535
  %8732 = vmatpush.bf16.msra.mxu0 %v7532
  %8733 = vmatpush.bf16.msra.mxu0 %v7529
  %8734 = vmatpush.bf16.msra.mxu0 %v7526
  %8735 = vmatpush.bf16.msra.mxu0 %v7523
  %8736 = vmatmul.bf16.gmra.mxu0 %v6010
  %v8737 = vpop.f32.mrf.mxu0
  %v8738 = vadd.f32 0.0, %v8737
  %v8739 = vpop.f32.mrf.mxu0
  %v8740 = vadd.f32 0.0, %v8739
  %8741 = vmatmul.bf16.gmra.mxu0 %v6028
  %v8742 = vpop.f32.mrf.mxu0
  %v8743 = vadd.f32 0.0, %v8742
  %v8744 = vpop.f32.mrf.mxu0
  %v8745 = vadd.f32 0.0, %v8744
  %8746 = vdwg.mxu0
  %8747 = vmatpush.bf16.msra.mxu0 %v7568
  %8748 = vmatpush.bf16.msra.mxu0 %v7565
  %8749 = vmatpush.bf16.msra.mxu0 %v7562
  %8750 = vmatpush.bf16.msra.mxu0 %v7559
  %8751 = vmatpush.bf16.msra.mxu0 %v7556
  %8752 = vmatpush.bf16.msra.mxu0 %v7553
  %8753 = vmatpush.bf16.msra.mxu0 %v7550
  %8754 = vmatpush.bf16.msra.mxu0 %v7547
  %8755 = vmatmul.bf16.gmra.mxu0 %v6011
  %v8756 = vpop.f32.mrf.mxu0
  %v8757 = vadd.f32 %v8738, %v8756
  %v8758 = vpop.f32.mrf.mxu0
  %v8759 = vadd.f32 %v8740, %v8758
  %8760 = vmatmul.bf16.gmra.mxu0 %v6029
  %v8761 = vpop.f32.mrf.mxu0
  %v8762 = vadd.f32 %v8743, %v8761
  %v8763 = vpop.f32.mrf.mxu0
  %v8764 = vadd.f32 %v8745, %v8763
  %8765 = vdwg.mxu0
  %8766 = vmatpush.bf16.msra.mxu0 %v7592
  %8767 = vmatpush.bf16.msra.mxu0 %v7589
  %8768 = vmatpush.bf16.msra.mxu0 %v7586
  %8769 = vmatpush.bf16.msra.mxu0 %v7583
  %8770 = vmatpush.bf16.msra.mxu0 %v7580
  %8771 = vmatpush.bf16.msra.mxu0 %v7577
  %8772 = vmatpush.bf16.msra.mxu0 %v7574
  %8773 = vmatpush.bf16.msra.mxu0 %v7571
  %8774 = vmatmul.bf16.gmra.mxu0 %v6012
  %v8775 = vpop.f32.mrf.mxu0
  %v8776 = vadd.f32 %v8757, %v8775
  %v8777 = vpop.f32.mrf.mxu0
  %v8778 = vadd.f32 %v8759, %v8777
  %8779 = vmatmul.bf16.gmra.mxu0 %v6030
  %v8780 = vpop.f32.mrf.mxu0
  %v8781 = vadd.f32 %v8762, %v8780
  %v8782 = vpop.f32.mrf.mxu0
  %v8783 = vadd.f32 %v8764, %v8782
  %8784 = vdwg.mxu0
  %8785 = vmatpush.bf16.msra.mxu0 %v7616
  %8786 = vmatpush.bf16.msra.mxu0 %v7613
  %8787 = vmatpush.bf16.msra.mxu0 %v7610
  %8788 = vmatpush.bf16.msra.mxu0 %v7607
  %8789 = vmatpush.bf16.msra.mxu0 %v7604
  %8790 = vmatpush.bf16.msra.mxu0 %v7601
  %8791 = vmatpush.bf16.msra.mxu0 %v7598
  %8792 = vmatpush.bf16.msra.mxu0 %v7595
  %8793 = vmatmul.bf16.gmra.mxu0 %v6013
  %v8794 = vpop.f32.mrf.mxu0
  %v8795 = vadd.f32 %v8776, %v8794
  %v8796 = vpop.f32.mrf.mxu0
  %v8797 = vadd.f32 %v8778, %v8796
  %8798 = vmatmul.bf16.gmra.mxu0 %v6031
  %v8799 = vpop.f32.mrf.mxu0
  %v8800 = vadd.f32 %v8781, %v8799
  %v8801 = vpop.f32.mrf.mxu0
  %v8802 = vadd.f32 %v8783, %v8801
  %8803 = vdwg.mxu0
  %8804 = vmatpush.bf16.msra.mxu0 %v7640
  %8805 = vmatpush.bf16.msra.mxu0 %v7637
  %8806 = vmatpush.bf16.msra.mxu0 %v7634
  %8807 = vmatpush.bf16.msra.mxu0 %v7631
  %8808 = vmatpush.bf16.msra.mxu0 %v7628
  %8809 = vmatpush.bf16.msra.mxu0 %v7625
  %8810 = vmatpush.bf16.msra.mxu0 %v7622
  %8811 = vmatpush.bf16.msra.mxu0 %v7619
  %8812 = vmatmul.bf16.gmra.mxu0 %v6014
  %v8813 = vpop.f32.mrf.mxu0
  %v8814 = vadd.f32 %v8795, %v8813
  %v8815 = vpop.f32.mrf.mxu0
  %v8816 = vadd.f32 %v8797, %v8815
  %8817 = vmatmul.bf16.gmra.mxu0 %v6032
  %v8818 = vpop.f32.mrf.mxu0
  %v8819 = vadd.f32 %v8800, %v8818
  %v8820 = vpop.f32.mrf.mxu0
  %v8821 = vadd.f32 %v8802, %v8820
  %8822 = vdwg.mxu0
  %8823 = vmatpush.bf16.msra.mxu0 %v7664
  %8824 = vmatpush.bf16.msra.mxu0 %v7661
  %8825 = vmatpush.bf16.msra.mxu0 %v7658
  %8826 = vmatpush.bf16.msra.mxu0 %v7655
  %8827 = vmatpush.bf16.msra.mxu0 %v7652
  %8828 = vmatpush.bf16.msra.mxu0 %v7649
  %8829 = vmatpush.bf16.msra.mxu0 %v7646
  %8830 = vmatpush.bf16.msra.mxu0 %v7643
  %8831 = vmatmul.bf16.gmra.mxu0 %v6015
  %v8832 = vpop.f32.mrf.mxu0
  %v8833 = vadd.f32 %v8814, %v8832
  %v8834 = vpop.f32.mrf.mxu0
  %v8835 = vadd.f32 %v8816, %v8834
  %8836 = vmatmul.bf16.gmra.mxu0 %v6033
  %v8837 = vpop.f32.mrf.mxu0
  %v8838 = vadd.f32 %v8819, %v8837
  %v8839 = vpop.f32.mrf.mxu0
  %v8840 = vadd.f32 %v8821, %v8839
  %8841 = vdwg.mxu0
  %8842 = vmatpush.bf16.msra.mxu0 %v7688
  %8843 = vmatpush.bf16.msra.mxu0 %v7685
  %8844 = vmatpush.bf16.msra.mxu0 %v7682
  %8845 = vmatpush.bf16.msra.mxu0 %v7679
  %8846 = vmatpush.bf16.msra.mxu0 %v7676
  %8847 = vmatpush.bf16.msra.mxu0 %v7673
  %8848 = vmatpush.bf16.msra.mxu0 %v7670
  %8849 = vmatpush.bf16.msra.mxu0 %v7667
  %8850 = vmatmul.bf16.gmra.mxu0 %v6016
  %v8851 = vpop.f32.mrf.mxu0
  %v8852 = vadd.f32 %v8833, %v8851
  %v8853 = vpop.f32.mrf.mxu0
  %v8854 = vadd.f32 %v8835, %v8853
  %8855 = vmatmul.bf16.gmra.mxu0 %v6034
  %v8856 = vpop.f32.mrf.mxu0
  %v8857 = vadd.f32 %v8838, %v8856
  %v8858 = vpop.f32.mrf.mxu0
  %v8859 = vadd.f32 %v8840, %v8858
  %8860 = vdwg.mxu0
  %8861 = vmatpush.bf16.msra.mxu0 %v7712
  %8862 = vmatpush.bf16.msra.mxu0 %v7709
  %8863 = vmatpush.bf16.msra.mxu0 %v7706
  %8864 = vmatpush.bf16.msra.mxu0 %v7703
  %8865 = vmatpush.bf16.msra.mxu0 %v7700
  %8866 = vmatpush.bf16.msra.mxu0 %v7697
  %8867 = vmatpush.bf16.msra.mxu0 %v7694
  %8868 = vmatpush.bf16.msra.mxu0 %v7691
  %8869 = vmatmul.bf16.gmra.mxu0 %v6017
  %v8870 = vpop.f32.mrf.mxu0
  %v8871 = vadd.f32 %v8852, %v8870
  %v8872 = vpop.f32.mrf.mxu0
  %v8873 = vadd.f32 %v8854, %v8872
  %8874 = vmatmul.bf16.gmra.mxu0 %v6035
  %v8875 = vpop.f32.mrf.mxu0
  %v8876 = vadd.f32 %v8857, %v8875
  %v8877 = vpop.f32.mrf.mxu0
  %v8878 = vadd.f32 %v8859, %v8877
  %8879 = vdwg.mxu0
  %8880 = vmatpush.bf16.msra.mxu0 %v7736
  %8881 = vmatpush.bf16.msra.mxu0 %v7733
  %8882 = vmatpush.bf16.msra.mxu0 %v7730
  %8883 = vmatpush.bf16.msra.mxu0 %v7727
  %8884 = vmatpush.bf16.msra.mxu0 %v7724
  %8885 = vmatpush.bf16.msra.mxu0 %v7721
  %8886 = vmatpush.bf16.msra.mxu0 %v7718
  %8887 = vmatpush.bf16.msra.mxu0 %v7715
  %8888 = vmatmul.bf16.gmra.mxu0 %v6018
  %v8889 = vpop.f32.mrf.mxu0
  %v8890 = vadd.f32 %v8871, %v8889
  %v8891 = vpop.f32.mrf.mxu0
  %v8892 = vadd.f32 %v8873, %v8891
  %8893 = vmatmul.bf16.gmra.mxu0 %v6036
  %v8894 = vpop.f32.mrf.mxu0
  %v8895 = vadd.f32 %v8876, %v8894
  %v8896 = vpop.f32.mrf.mxu0
  %v8897 = vadd.f32 %v8878, %v8896
  %8898 = vdwg.mxu0
  %8899 = vmatpush.bf16.msra.mxu0 %v7760
  %8900 = vmatpush.bf16.msra.mxu0 %v7757
  %8901 = vmatpush.bf16.msra.mxu0 %v7754
  %8902 = vmatpush.bf16.msra.mxu0 %v7751
  %8903 = vmatpush.bf16.msra.mxu0 %v7748
  %8904 = vmatpush.bf16.msra.mxu0 %v7745
  %8905 = vmatpush.bf16.msra.mxu0 %v7742
  %8906 = vmatpush.bf16.msra.mxu0 %v7739
  %8907 = vmatmul.bf16.gmra.mxu0 %v6019
  %v8908 = vpop.f32.mrf.mxu0
  %v8909 = vadd.f32 %v8890, %v8908
  %v8910 = vpop.f32.mrf.mxu0
  %v8911 = vadd.f32 %v8892, %v8910
  %8912 = vmatmul.bf16.gmra.mxu0 %v6037
  %v8913 = vpop.f32.mrf.mxu0
  %v8914 = vadd.f32 %v8895, %v8913
  %v8915 = vpop.f32.mrf.mxu0
  %v8916 = vadd.f32 %v8897, %v8915
  %8917 = vdwg.mxu0
  %8918 = vmatpush.bf16.msra.mxu0 %v7784
  %8919 = vmatpush.bf16.msra.mxu0 %v7781
  %8920 = vmatpush.bf16.msra.mxu0 %v7778
  %8921 = vmatpush.bf16.msra.mxu0 %v7775
  %8922 = vmatpush.bf16.msra.mxu0 %v7772
  %8923 = vmatpush.bf16.msra.mxu0 %v7769
  %8924 = vmatpush.bf16.msra.mxu0 %v7766
  %8925 = vmatpush.bf16.msra.mxu0 %v7763
  %8926 = vmatmul.bf16.gmra.mxu0 %v6020
  %v8927 = vpop.f32.mrf.mxu0
  %v8928 = vadd.f32 %v8909, %v8927
  %v8929 = vpop.f32.mrf.mxu0
  %v8930 = vadd.f32 %v8911, %v8929
  %8931 = vmatmul.bf16.gmra.mxu0 %v6038
  %v8932 = vpop.f32.mrf.mxu0
  %v8933 = vadd.f32 %v8914, %v8932
  %v8934 = vpop.f32.mrf.mxu0
  %v8935 = vadd.f32 %v8916, %v8934
  %8936 = vdwg.mxu0
  %8937 = vmatpush.bf16.msra.mxu0 %v7808
  %8938 = vmatpush.bf16.msra.mxu0 %v7805
  %8939 = vmatpush.bf16.msra.mxu0 %v7802
  %8940 = vmatpush.bf16.msra.mxu0 %v7799
  %8941 = vmatpush.bf16.msra.mxu0 %v7796
  %8942 = vmatpush.bf16.msra.mxu0 %v7793
  %8943 = vmatpush.bf16.msra.mxu0 %v7790
  %8944 = vmatpush.bf16.msra.mxu0 %v7787
  %8945 = vmatmul.bf16.gmra.mxu0 %v6021
  %v8946 = vpop.f32.mrf.mxu0
  %v8947 = vadd.f32 %v8928, %v8946
  %v8948 = vpop.f32.mrf.mxu0
  %v8949 = vadd.f32 %v8930, %v8948
  %8950 = vmatmul.bf16.gmra.mxu0 %v6039
  %v8951 = vpop.f32.mrf.mxu0
  %v8952 = vadd.f32 %v8933, %v8951
  %v8953 = vpop.f32.mrf.mxu0
  %v8954 = vadd.f32 %v8935, %v8953
  %8955 = vdwg.mxu0
  %8956 = vmatpush.bf16.msra.mxu0 %v7832
  %8957 = vmatpush.bf16.msra.mxu0 %v7829
  %8958 = vmatpush.bf16.msra.mxu0 %v7826
  %8959 = vmatpush.bf16.msra.mxu0 %v7823
  %8960 = vmatpush.bf16.msra.mxu0 %v7820
  %8961 = vmatpush.bf16.msra.mxu0 %v7817
  %8962 = vmatpush.bf16.msra.mxu0 %v7814
  %8963 = vmatpush.bf16.msra.mxu0 %v7811
  %8964 = vmatmul.bf16.gmra.mxu0 %v6022
  %v8965 = vpop.f32.mrf.mxu0
  %v8966 = vadd.f32 %v8947, %v8965
  %v8967 = vpop.f32.mrf.mxu0
  %v8968 = vadd.f32 %v8949, %v8967
  %8969 = vmatmul.bf16.gmra.mxu0 %v6040
  %v8970 = vpop.f32.mrf.mxu0
  %v8971 = vadd.f32 %v8952, %v8970
  %v8972 = vpop.f32.mrf.mxu0
  %v8973 = vadd.f32 %v8954, %v8972
  %8974 = vdwg.mxu0
  %8975 = vmatpush.bf16.msra.mxu0 %v7856
  %8976 = vmatpush.bf16.msra.mxu0 %v7853
  %8977 = vmatpush.bf16.msra.mxu0 %v7850
  %8978 = vmatpush.bf16.msra.mxu0 %v7847
  %8979 = vmatpush.bf16.msra.mxu0 %v7844
  %8980 = vmatpush.bf16.msra.mxu0 %v7841
  %8981 = vmatpush.bf16.msra.mxu0 %v7838
  %8982 = vmatpush.bf16.msra.mxu0 %v7835
  %8983 = vmatmul.bf16.gmra.mxu0 %v6023
  %v8984 = vpop.f32.mrf.mxu0
  %v8985 = vadd.f32 %v8966, %v8984
  %v8986 = vpop.f32.mrf.mxu0
  %v8987 = vadd.f32 %v8968, %v8986
  %8988 = vmatmul.bf16.gmra.mxu0 %v6041
  %v8989 = vpop.f32.mrf.mxu0
  %v8990 = vadd.f32 %v8971, %v8989
  %v8991 = vpop.f32.mrf.mxu0
  %v8992 = vadd.f32 %v8973, %v8991
  %8993 = vdwg.mxu0
  %8994 = vmatpush.bf16.msra.mxu0 %v7880
  %8995 = vmatpush.bf16.msra.mxu0 %v7877
  %8996 = vmatpush.bf16.msra.mxu0 %v7874
  %8997 = vmatpush.bf16.msra.mxu0 %v7871
  %8998 = vmatpush.bf16.msra.mxu0 %v7868
  %8999 = vmatpush.bf16.msra.mxu0 %v7865
  %9000 = vmatpush.bf16.msra.mxu0 %v7862
  %9001 = vmatpush.bf16.msra.mxu0 %v7859
  %9002 = vmatmul.bf16.gmra.mxu0 %v6024
  %v9003 = vpop.f32.mrf.mxu0
  %v9004 = vadd.f32 %v8985, %v9003
  %v9005 = vpop.f32.mrf.mxu0
  %v9006 = vadd.f32 %v8987, %v9005
  %9007 = vmatmul.bf16.gmra.mxu0 %v6042
  %v9008 = vpop.f32.mrf.mxu0
  %v9009 = vadd.f32 %v8990, %v9008
  %v9010 = vpop.f32.mrf.mxu0
  %v9011 = vadd.f32 %v8992, %v9010
  %9012 = vdwg.mxu0
  %9013 = vmatpush.bf16.msra.mxu0 %v7904
  %9014 = vmatpush.bf16.msra.mxu0 %v7901
  %9015 = vmatpush.bf16.msra.mxu0 %v7898
  %9016 = vmatpush.bf16.msra.mxu0 %v7895
  %9017 = vmatpush.bf16.msra.mxu0 %v7892
  %9018 = vmatpush.bf16.msra.mxu0 %v7889
  %9019 = vmatpush.bf16.msra.mxu0 %v7886
  %9020 = vmatpush.bf16.msra.mxu0 %v7883
  %9021 = vmatmul.bf16.gmra.mxu0 %v6025
  %v9022 = vpop.f32.mrf.mxu0
  %v9023 = vadd.f32 %v9004, %v9022
  %v9024 = vpop.f32.mrf.mxu0
  %v9025 = vadd.f32 %v9006, %v9024
  %9026 = vmatmul.bf16.gmra.mxu0 %v6043
  %v9027 = vpop.f32.mrf.mxu0
  %v9028 = vadd.f32 %v9009, %v9027
  %v9029 = vpop.f32.mrf.mxu0
  %v9030 = vadd.f32 %v9011, %v9029
  %9031 = vdwg.mxu0
  %9032 = vmatpush.bf16.msra.mxu0 %v7928
  %9033 = vmatpush.bf16.msra.mxu0 %v7925
  %9034 = vmatpush.bf16.msra.mxu0 %v7922
  %9035 = vmatpush.bf16.msra.mxu0 %v7919
  %9036 = vmatpush.bf16.msra.mxu0 %v7916
  %9037 = vmatpush.bf16.msra.mxu0 %v7913
  %9038 = vmatpush.bf16.msra.mxu0 %v7910
  %9039 = vmatpush.bf16.msra.mxu0 %v7907
  %9040 = vmatmul.bf16.gmra.mxu0 %v6026
  %v9041 = vpop.f32.mrf.mxu0
  %v9042 = vadd.f32 %v9023, %v9041
  %v9043 = vpop.f32.mrf.mxu0
  %v9044 = vadd.f32 %v9025, %v9043
  %9045 = vmatmul.bf16.gmra.mxu0 %v6044
  %v9046 = vpop.f32.mrf.mxu0
  %v9047 = vadd.f32 %v9028, %v9046
  %v9048 = vpop.f32.mrf.mxu0
  %v9049 = vadd.f32 %v9030, %v9048
  %9050 = vdwg.mxu0
  %9051 = vmatpush.bf16.msra.mxu0 %v7952
  %9052 = vmatpush.bf16.msra.mxu0 %v7949
  %9053 = vmatpush.bf16.msra.mxu0 %v7946
  %9054 = vmatpush.bf16.msra.mxu0 %v7943
  %9055 = vmatpush.bf16.msra.mxu0 %v7940
  %9056 = vmatpush.bf16.msra.mxu0 %v7937
  %9057 = vmatpush.bf16.msra.mxu0 %v7934
  %9058 = vmatpush.bf16.msra.mxu0 %v7931
  %9059 = vmatmul.bf16.gmra.mxu0 %v6027
  %v9060 = vpop.f32.mrf.mxu0
  %v9061 = vadd.f32 %v9042, %v9060
  %v9062 = vpop.f32.mrf.mxu0
  %v9063 = vadd.f32 %v9044, %v9062
  %9064 = vmatmul.bf16.gmra.mxu0 %v6045
  %v9065 = vpop.f32.mrf.mxu0
  %v9066 = vadd.f32 %v9047, %v9065
  %v9067 = vpop.f32.mrf.mxu0
  %v9068 = vadd.f32 %v9049, %v9067
  %9069 = vdwg.mxu0
  %9070 = vmatpush.bf16.msra.mxu0 %v7545
  %9071 = vmatpush.bf16.msra.mxu0 %v7542
  %9072 = vmatpush.bf16.msra.mxu0 %v7539
  %9073 = vmatpush.bf16.msra.mxu0 %v7536
  %9074 = vmatpush.bf16.msra.mxu0 %v7533
  %9075 = vmatpush.bf16.msra.mxu0 %v7530
  %9076 = vmatpush.bf16.msra.mxu0 %v7527
  %9077 = vmatpush.bf16.msra.mxu0 %v7524
  %9078 = vmatmul.bf16.gmra.mxu0 %v6010
  %v9079 = vpop.f32.mrf.mxu0
  %v9080 = vadd.f32 0.0, %v9079
  %v9081 = vpop.f32.mrf.mxu0
  %v9082 = vadd.f32 0.0, %v9081
  %9083 = vmatmul.bf16.gmra.mxu0 %v6028
  %v9084 = vpop.f32.mrf.mxu0
  %v9085 = vadd.f32 0.0, %v9084
  %v9086 = vpop.f32.mrf.mxu0
  %v9087 = vadd.f32 0.0, %v9086
  %9088 = vdwg.mxu0
  %9089 = vmatpush.bf16.msra.mxu0 %v7569
  %9090 = vmatpush.bf16.msra.mxu0 %v7566
  %9091 = vmatpush.bf16.msra.mxu0 %v7563
  %9092 = vmatpush.bf16.msra.mxu0 %v7560
  %9093 = vmatpush.bf16.msra.mxu0 %v7557
  %9094 = vmatpush.bf16.msra.mxu0 %v7554
  %9095 = vmatpush.bf16.msra.mxu0 %v7551
  %9096 = vmatpush.bf16.msra.mxu0 %v7548
  %9097 = vmatmul.bf16.gmra.mxu0 %v6011
  %v9098 = vpop.f32.mrf.mxu0
  %v9099 = vadd.f32 %v9080, %v9098
  %v9100 = vpop.f32.mrf.mxu0
  %v9101 = vadd.f32 %v9082, %v9100
  %9102 = vmatmul.bf16.gmra.mxu0 %v6029
  %v9103 = vpop.f32.mrf.mxu0
  %v9104 = vadd.f32 %v9085, %v9103
  %v9105 = vpop.f32.mrf.mxu0
  %v9106 = vadd.f32 %v9087, %v9105
  %9107 = vdwg.mxu0
  %9108 = vmatpush.bf16.msra.mxu0 %v7593
  %9109 = vmatpush.bf16.msra.mxu0 %v7590
  %9110 = vmatpush.bf16.msra.mxu0 %v7587
  %9111 = vmatpush.bf16.msra.mxu0 %v7584
  %9112 = vmatpush.bf16.msra.mxu0 %v7581
  %9113 = vmatpush.bf16.msra.mxu0 %v7578
  %9114 = vmatpush.bf16.msra.mxu0 %v7575
  %9115 = vmatpush.bf16.msra.mxu0 %v7572
  %9116 = vmatmul.bf16.gmra.mxu0 %v6012
  %v9117 = vpop.f32.mrf.mxu0
  %v9118 = vadd.f32 %v9099, %v9117
  %v9119 = vpop.f32.mrf.mxu0
  %v9120 = vadd.f32 %v9101, %v9119
  %9121 = vmatmul.bf16.gmra.mxu0 %v6030
  %v9122 = vpop.f32.mrf.mxu0
  %v9123 = vadd.f32 %v9104, %v9122
  %v9124 = vpop.f32.mrf.mxu0
  %v9125 = vadd.f32 %v9106, %v9124
  %9126 = vdwg.mxu0
  %9127 = vmatpush.bf16.msra.mxu0 %v7617
  %9128 = vmatpush.bf16.msra.mxu0 %v7614
  %9129 = vmatpush.bf16.msra.mxu0 %v7611
  %9130 = vmatpush.bf16.msra.mxu0 %v7608
  %9131 = vmatpush.bf16.msra.mxu0 %v7605
  %9132 = vmatpush.bf16.msra.mxu0 %v7602
  %9133 = vmatpush.bf16.msra.mxu0 %v7599
  %9134 = vmatpush.bf16.msra.mxu0 %v7596
  %9135 = vmatmul.bf16.gmra.mxu0 %v6013
  %v9136 = vpop.f32.mrf.mxu0
  %v9137 = vadd.f32 %v9118, %v9136
  %v9138 = vpop.f32.mrf.mxu0
  %v9139 = vadd.f32 %v9120, %v9138
  %9140 = vmatmul.bf16.gmra.mxu0 %v6031
  %v9141 = vpop.f32.mrf.mxu0
  %v9142 = vadd.f32 %v9123, %v9141
  %v9143 = vpop.f32.mrf.mxu0
  %v9144 = vadd.f32 %v9125, %v9143
  %9145 = vdwg.mxu0
  %9146 = vmatpush.bf16.msra.mxu0 %v7641
  %9147 = vmatpush.bf16.msra.mxu0 %v7638
  %9148 = vmatpush.bf16.msra.mxu0 %v7635
  %9149 = vmatpush.bf16.msra.mxu0 %v7632
  %9150 = vmatpush.bf16.msra.mxu0 %v7629
  %9151 = vmatpush.bf16.msra.mxu0 %v7626
  %9152 = vmatpush.bf16.msra.mxu0 %v7623
  %9153 = vmatpush.bf16.msra.mxu0 %v7620
  %9154 = vmatmul.bf16.gmra.mxu0 %v6014
  %v9155 = vpop.f32.mrf.mxu0
  %v9156 = vadd.f32 %v9137, %v9155
  %v9157 = vpop.f32.mrf.mxu0
  %v9158 = vadd.f32 %v9139, %v9157
  %9159 = vmatmul.bf16.gmra.mxu0 %v6032
  %v9160 = vpop.f32.mrf.mxu0
  %v9161 = vadd.f32 %v9142, %v9160
  %v9162 = vpop.f32.mrf.mxu0
  %v9163 = vadd.f32 %v9144, %v9162
  %9164 = vdwg.mxu0
  %9165 = vmatpush.bf16.msra.mxu0 %v7665
  %9166 = vmatpush.bf16.msra.mxu0 %v7662
  %9167 = vmatpush.bf16.msra.mxu0 %v7659
  %9168 = vmatpush.bf16.msra.mxu0 %v7656
  %9169 = vmatpush.bf16.msra.mxu0 %v7653
  %9170 = vmatpush.bf16.msra.mxu0 %v7650
  %9171 = vmatpush.bf16.msra.mxu0 %v7647
  %9172 = vmatpush.bf16.msra.mxu0 %v7644
  %9173 = vmatmul.bf16.gmra.mxu0 %v6015
  %v9174 = vpop.f32.mrf.mxu0
  %v9175 = vadd.f32 %v9156, %v9174
  %v9176 = vpop.f32.mrf.mxu0
  %v9177 = vadd.f32 %v9158, %v9176
  %9178 = vmatmul.bf16.gmra.mxu0 %v6033
  %v9179 = vpop.f32.mrf.mxu0
  %v9180 = vadd.f32 %v9161, %v9179
  %v9181 = vpop.f32.mrf.mxu0
  %v9182 = vadd.f32 %v9163, %v9181
  %9183 = vdwg.mxu0
  %9184 = vmatpush.bf16.msra.mxu0 %v7689
  %9185 = vmatpush.bf16.msra.mxu0 %v7686
  %9186 = vmatpush.bf16.msra.mxu0 %v7683
  %9187 = vmatpush.bf16.msra.mxu0 %v7680
  %9188 = vmatpush.bf16.msra.mxu0 %v7677
  %9189 = vmatpush.bf16.msra.mxu0 %v7674
  %9190 = vmatpush.bf16.msra.mxu0 %v7671
  %9191 = vmatpush.bf16.msra.mxu0 %v7668
  %9192 = vmatmul.bf16.gmra.mxu0 %v6016
  %v9193 = vpop.f32.mrf.mxu0
  %v9194 = vadd.f32 %v9175, %v9193
  %v9195 = vpop.f32.mrf.mxu0
  %v9196 = vadd.f32 %v9177, %v9195
  %9197 = vmatmul.bf16.gmra.mxu0 %v6034
  %v9198 = vpop.f32.mrf.mxu0
  %v9199 = vadd.f32 %v9180, %v9198
  %v9200 = vpop.f32.mrf.mxu0
  %v9201 = vadd.f32 %v9182, %v9200
  %9202 = vdwg.mxu0
  %9203 = vmatpush.bf16.msra.mxu0 %v7713
  %9204 = vmatpush.bf16.msra.mxu0 %v7710
  %9205 = vmatpush.bf16.msra.mxu0 %v7707
  %9206 = vmatpush.bf16.msra.mxu0 %v7704
  %9207 = vmatpush.bf16.msra.mxu0 %v7701
  %9208 = vmatpush.bf16.msra.mxu0 %v7698
  %9209 = vmatpush.bf16.msra.mxu0 %v7695
  %9210 = vmatpush.bf16.msra.mxu0 %v7692
  %9211 = vmatmul.bf16.gmra.mxu0 %v6017
  %v9212 = vpop.f32.mrf.mxu0
  %v9213 = vadd.f32 %v9194, %v9212
  %v9214 = vpop.f32.mrf.mxu0
  %v9215 = vadd.f32 %v9196, %v9214
  %9216 = vmatmul.bf16.gmra.mxu0 %v6035
  %v9217 = vpop.f32.mrf.mxu0
  %v9218 = vadd.f32 %v9199, %v9217
  %v9219 = vpop.f32.mrf.mxu0
  %v9220 = vadd.f32 %v9201, %v9219
  %9221 = vdwg.mxu0
  %9222 = vmatpush.bf16.msra.mxu0 %v7737
  %9223 = vmatpush.bf16.msra.mxu0 %v7734
  %9224 = vmatpush.bf16.msra.mxu0 %v7731
  %9225 = vmatpush.bf16.msra.mxu0 %v7728
  %9226 = vmatpush.bf16.msra.mxu0 %v7725
  %9227 = vmatpush.bf16.msra.mxu0 %v7722
  %9228 = vmatpush.bf16.msra.mxu0 %v7719
  %9229 = vmatpush.bf16.msra.mxu0 %v7716
  %9230 = vmatmul.bf16.gmra.mxu0 %v6018
  %v9231 = vpop.f32.mrf.mxu0
  %v9232 = vadd.f32 %v9213, %v9231
  %v9233 = vpop.f32.mrf.mxu0
  %v9234 = vadd.f32 %v9215, %v9233
  %9235 = vmatmul.bf16.gmra.mxu0 %v6036
  %v9236 = vpop.f32.mrf.mxu0
  %v9237 = vadd.f32 %v9218, %v9236
  %v9238 = vpop.f32.mrf.mxu0
  %v9239 = vadd.f32 %v9220, %v9238
  %9240 = vdwg.mxu0
  %9241 = vmatpush.bf16.msra.mxu0 %v7761
  %9242 = vmatpush.bf16.msra.mxu0 %v7758
  %9243 = vmatpush.bf16.msra.mxu0 %v7755
  %9244 = vmatpush.bf16.msra.mxu0 %v7752
  %9245 = vmatpush.bf16.msra.mxu0 %v7749
  %9246 = vmatpush.bf16.msra.mxu0 %v7746
  %9247 = vmatpush.bf16.msra.mxu0 %v7743
  %9248 = vmatpush.bf16.msra.mxu0 %v7740
  %9249 = vmatmul.bf16.gmra.mxu0 %v6019
  %v9250 = vpop.f32.mrf.mxu0
  %v9251 = vadd.f32 %v9232, %v9250
  %v9252 = vpop.f32.mrf.mxu0
  %v9253 = vadd.f32 %v9234, %v9252
  %9254 = vmatmul.bf16.gmra.mxu0 %v6037
  %v9255 = vpop.f32.mrf.mxu0
  %v9256 = vadd.f32 %v9237, %v9255
  %v9257 = vpop.f32.mrf.mxu0
  %v9258 = vadd.f32 %v9239, %v9257
  %9259 = vdwg.mxu0
  %9260 = vmatpush.bf16.msra.mxu0 %v7785
  %9261 = vmatpush.bf16.msra.mxu0 %v7782
  %9262 = vmatpush.bf16.msra.mxu0 %v7779
  %9263 = vmatpush.bf16.msra.mxu0 %v7776
  %9264 = vmatpush.bf16.msra.mxu0 %v7773
  %9265 = vmatpush.bf16.msra.mxu0 %v7770
  %9266 = vmatpush.bf16.msra.mxu0 %v7767
  %9267 = vmatpush.bf16.msra.mxu0 %v7764
  %9268 = vmatmul.bf16.gmra.mxu0 %v6020
  %v9269 = vpop.f32.mrf.mxu0
  %v9270 = vadd.f32 %v9251, %v9269
  %v9271 = vpop.f32.mrf.mxu0
  %v9272 = vadd.f32 %v9253, %v9271
  %9273 = vmatmul.bf16.gmra.mxu0 %v6038
  %v9274 = vpop.f32.mrf.mxu0
  %v9275 = vadd.f32 %v9256, %v9274
  %v9276 = vpop.f32.mrf.mxu0
  %v9277 = vadd.f32 %v9258, %v9276
  %9278 = vdwg.mxu0
  %9279 = vmatpush.bf16.msra.mxu0 %v7809
  %9280 = vmatpush.bf16.msra.mxu0 %v7806
  %9281 = vmatpush.bf16.msra.mxu0 %v7803
  %9282 = vmatpush.bf16.msra.mxu0 %v7800
  %9283 = vmatpush.bf16.msra.mxu0 %v7797
  %9284 = vmatpush.bf16.msra.mxu0 %v7794
  %9285 = vmatpush.bf16.msra.mxu0 %v7791
  %9286 = vmatpush.bf16.msra.mxu0 %v7788
  %9287 = vmatmul.bf16.gmra.mxu0 %v6021
  %v9288 = vpop.f32.mrf.mxu0
  %v9289 = vadd.f32 %v9270, %v9288
  %v9290 = vpop.f32.mrf.mxu0
  %v9291 = vadd.f32 %v9272, %v9290
  %9292 = vmatmul.bf16.gmra.mxu0 %v6039
  %v9293 = vpop.f32.mrf.mxu0
  %v9294 = vadd.f32 %v9275, %v9293
  %v9295 = vpop.f32.mrf.mxu0
  %v9296 = vadd.f32 %v9277, %v9295
  %9297 = vdwg.mxu0
  %9298 = vmatpush.bf16.msra.mxu0 %v7833
  %9299 = vmatpush.bf16.msra.mxu0 %v7830
  %9300 = vmatpush.bf16.msra.mxu0 %v7827
  %9301 = vmatpush.bf16.msra.mxu0 %v7824
  %9302 = vmatpush.bf16.msra.mxu0 %v7821
  %9303 = vmatpush.bf16.msra.mxu0 %v7818
  %9304 = vmatpush.bf16.msra.mxu0 %v7815
  %9305 = vmatpush.bf16.msra.mxu0 %v7812
  %9306 = vmatmul.bf16.gmra.mxu0 %v6022
  %v9307 = vpop.f32.mrf.mxu0
  %v9308 = vadd.f32 %v9289, %v9307
  %v9309 = vpop.f32.mrf.mxu0
  %v9310 = vadd.f32 %v9291, %v9309
  %9311 = vmatmul.bf16.gmra.mxu0 %v6040
  %v9312 = vpop.f32.mrf.mxu0
  %v9313 = vadd.f32 %v9294, %v9312
  %v9314 = vpop.f32.mrf.mxu0
  %v9315 = vadd.f32 %v9296, %v9314
  %9316 = vdwg.mxu0
  %9317 = vmatpush.bf16.msra.mxu0 %v7857
  %9318 = vmatpush.bf16.msra.mxu0 %v7854
  %9319 = vmatpush.bf16.msra.mxu0 %v7851
  %9320 = vmatpush.bf16.msra.mxu0 %v7848
  %9321 = vmatpush.bf16.msra.mxu0 %v7845
  %9322 = vmatpush.bf16.msra.mxu0 %v7842
  %9323 = vmatpush.bf16.msra.mxu0 %v7839
  %9324 = vmatpush.bf16.msra.mxu0 %v7836
  %9325 = vmatmul.bf16.gmra.mxu0 %v6023
  %v9326 = vpop.f32.mrf.mxu0
  %v9327 = vadd.f32 %v9308, %v9326
  %v9328 = vpop.f32.mrf.mxu0
  %v9329 = vadd.f32 %v9310, %v9328
  %9330 = vmatmul.bf16.gmra.mxu0 %v6041
  %v9331 = vpop.f32.mrf.mxu0
  %v9332 = vadd.f32 %v9313, %v9331
  %v9333 = vpop.f32.mrf.mxu0
  %v9334 = vadd.f32 %v9315, %v9333
  %9335 = vdwg.mxu0
  %9336 = vmatpush.bf16.msra.mxu0 %v7881
  %9337 = vmatpush.bf16.msra.mxu0 %v7878
  %9338 = vmatpush.bf16.msra.mxu0 %v7875
  %9339 = vmatpush.bf16.msra.mxu0 %v7872
  %9340 = vmatpush.bf16.msra.mxu0 %v7869
  %9341 = vmatpush.bf16.msra.mxu0 %v7866
  %9342 = vmatpush.bf16.msra.mxu0 %v7863
  %9343 = vmatpush.bf16.msra.mxu0 %v7860
  %9344 = vmatmul.bf16.gmra.mxu0 %v6024
  %v9345 = vpop.f32.mrf.mxu0
  %v9346 = vadd.f32 %v9327, %v9345
  %v9347 = vpop.f32.mrf.mxu0
  %v9348 = vadd.f32 %v9329, %v9347
  %9349 = vmatmul.bf16.gmra.mxu0 %v6042
  %v9350 = vpop.f32.mrf.mxu0
  %v9351 = vadd.f32 %v9332, %v9350
  %v9352 = vpop.f32.mrf.mxu0
  %v9353 = vadd.f32 %v9334, %v9352
  %9354 = vdwg.mxu0
  %9355 = vmatpush.bf16.msra.mxu0 %v7905
  %9356 = vmatpush.bf16.msra.mxu0 %v7902
  %9357 = vmatpush.bf16.msra.mxu0 %v7899
  %9358 = vmatpush.bf16.msra.mxu0 %v7896
  %9359 = vmatpush.bf16.msra.mxu0 %v7893
  %9360 = vmatpush.bf16.msra.mxu0 %v7890
  %9361 = vmatpush.bf16.msra.mxu0 %v7887
  %9362 = vmatpush.bf16.msra.mxu0 %v7884
  %9363 = vmatmul.bf16.gmra.mxu0 %v6025
  %v9364 = vpop.f32.mrf.mxu0
  %v9365 = vadd.f32 %v9346, %v9364
  %v9366 = vpop.f32.mrf.mxu0
  %v9367 = vadd.f32 %v9348, %v9366
  %9368 = vmatmul.bf16.gmra.mxu0 %v6043
  %v9369 = vpop.f32.mrf.mxu0
  %v9370 = vadd.f32 %v9351, %v9369
  %v9371 = vpop.f32.mrf.mxu0
  %v9372 = vadd.f32 %v9353, %v9371
  %9373 = vdwg.mxu0
  %9374 = vmatpush.bf16.msra.mxu0 %v7929
  %9375 = vmatpush.bf16.msra.mxu0 %v7926
  %9376 = vmatpush.bf16.msra.mxu0 %v7923
  %9377 = vmatpush.bf16.msra.mxu0 %v7920
  %9378 = vmatpush.bf16.msra.mxu0 %v7917
  %9379 = vmatpush.bf16.msra.mxu0 %v7914
  %9380 = vmatpush.bf16.msra.mxu0 %v7911
  %9381 = vmatpush.bf16.msra.mxu0 %v7908
  %9382 = vmatmul.bf16.gmra.mxu0 %v6026
  %v9383 = vpop.f32.mrf.mxu0
  %v9384 = vadd.f32 %v9365, %v9383
  %v9385 = vpop.f32.mrf.mxu0
  %v9386 = vadd.f32 %v9367, %v9385
  %9387 = vmatmul.bf16.gmra.mxu0 %v6044
  %v9388 = vpop.f32.mrf.mxu0
  %v9389 = vadd.f32 %v9370, %v9388
  %v9390 = vpop.f32.mrf.mxu0
  %v9391 = vadd.f32 %v9372, %v9390
  %9392 = vdwg.mxu0
  %9393 = vmatpush.bf16.msra.mxu0 %v7953
  %9394 = vmatpush.bf16.msra.mxu0 %v7950
  %9395 = vmatpush.bf16.msra.mxu0 %v7947
  %9396 = vmatpush.bf16.msra.mxu0 %v7944
  %9397 = vmatpush.bf16.msra.mxu0 %v7941
  %9398 = vmatpush.bf16.msra.mxu0 %v7938
  %9399 = vmatpush.bf16.msra.mxu0 %v7935
  %9400 = vmatpush.bf16.msra.mxu0 %v7932
  %9401 = vmatmul.bf16.gmra.mxu0 %v6027
  %v9402 = vpop.f32.mrf.mxu0
  %v9403 = vadd.f32 %v9384, %v9402
  %v9404 = vpop.f32.mrf.mxu0
  %v9405 = vadd.f32 %v9386, %v9404
  %9406 = vmatmul.bf16.gmra.mxu0 %v6045
  %v9407 = vpop.f32.mrf.mxu0
  %v9408 = vadd.f32 %v9389, %v9407
  %v9409 = vpop.f32.mrf.mxu0
  %v9410 = vadd.f32 %v9391, %v9409
  %9411 = vdwg.mxu0
  %v9412 = vld [vmem:[%s6] sm:$0x7]
  %v9414 = vperm.slane %v9412, 0
  %v9415 = vperm.slane %v9412, 1
  %v9416 = vperm.slane %v9412, 2
  %v9420 = vmul.f32 %v8719, %v9414
  %v9421 = vmul.f32 %v9061, %v9415
  %v9422 = vmul.f32 %v9403, %v9416
  %v9423 = vmul.f32 %v8721, %v9414
  %v9424 = vmul.f32 %v9063, %v9415
  %v9425 = vmul.f32 %v9405, %v9416
  %v9426 = vmul.f32 %v8724, %v9414
  %v9427 = vmul.f32 %v9066, %v9415
  %v9428 = vmul.f32 %v9408, %v9416
  %v9429 = vmul.f32 %v8726, %v9414
  %v9430 = vmul.f32 %v9068, %v9415
  %v9431 = vmul.f32 %v9410, %v9416
  %v9432 = vld [vmem:[%s7] sm:$0x7]
  %v9434 = vperm.slane %v9432, 0
  %v9435 = vperm.slane %v9432, 1
  %v9436 = vperm.slane %v9432, 2
  %v9440 = vadd.f32 %v9420, %v9434
  %v9441 = vadd.f32 %v9421, %v9435
  %v9442 = vadd.f32 %v9422, %v9436
  %v9443 = vadd.f32 %v9423, %v9434
  %v9444 = vadd.f32 %v9424, %v9435
  %v9445 = vadd.f32 %v9425, %v9436
  %v9446 = vadd.f32 %v9426, %v9434
  %v9447 = vadd.f32 %v9427, %v9435
  %v9448 = vadd.f32 %v9428, %v9436
  %v9449 = vadd.f32 %v9429, %v9434
  %v9450 = vadd.f32 %v9430, %v9435
  %v9451 = vadd.f32 %v9431, %v9436
  %v9452 = vmax.f32 %v9440, 0.0
  %v9453 = vmax.f32 %v9441, 0.0
  %v9454 = vmax.f32 %v9442, 0.0
  %v9455 = vmax.f32 %v9443, 0.0
  %v9456 = vmax.f32 %v9444, 0.0
  %v9457 = vmax.f32 %v9445, 0.0
  %v9458 = vmax.f32 %v9446, 0.0
  %v9459 = vmax.f32 %v9447, 0.0
  %v9460 = vmax.f32 %v9448, 0.0
  %v9461 = vmax.f32 %v9449, 0.0
  %v9462 = vmax.f32 %v9450, 0.0
  %v9463 = vmax.f32 %v9451, 0.0
  %9464 = vst [vmem:[%s8 + $0x18] sm:$0xff] %v9452
  %9465 = vst [vmem:[%s8 + $0x20] sm:$0xff] %v9453
  %9466 = vst [vmem:[%s8 + $0x28] sm:$0xff] %v9454
  %9467 = vst [vmem:[%s8 + $0x60] sm:$0xff] %v9455
  %9468 = vst [vmem:[%s8 + $0x68] sm:$0xff] %v9456
  %9469 = vst [vmem:[%s8 + $0x70] sm:$0xff] %v9457
  %9470 = vst [vmem:[%s8 + $0xa8] sm:$0xff] %v9458
  %9471 = vst [vmem:[%s8 + $0xb0] sm:$0xff] %v9459
  %9472 = vst [vmem:[%s8 + $0xb8] sm:$0xff] %v9460
  %9473 = vst [vmem:[%s8 + $0xf0] sm:$0xff] %v9461
  %9474 = vst [vmem:[%s8 + $0xf8] sm:$0xff] %v9462
  %9475 = vst [vmem:[%s8 + $0x100] sm:$0xff] %v9463
  %v9476 = vunpack.c.l.bf16 %v30
  %v9477 = vunpack.c.h.bf16 %v30
  %v9478 = vunpack.c.l.bf16 %v31
  %v9479 = vunpack.c.l.bf16 %v42
  %v9480 = vunpack.c.h.bf16 %v42
  %v9481 = vunpack.c.l.bf16 %v43
  %v9482 = vunpack.c.l.bf16 %v54
  %v9483 = vunpack.c.h.bf16 %v54
  %v9484 = vunpack.c.l.bf16 %v55
  %v9485 = vunpack.c.l.bf16 %v66
  %v9486 = vunpack.c.h.bf16 %v66
  %v9487 = vunpack.c.l.bf16 %v67
  %v9488 = vunpack.c.h.bf16 %v31
  %v9489 = vunpack.c.l.bf16 %v32
  %v9490 = vunpack.c.h.bf16 %v43
  %v9491 = vunpack.c.l.bf16 %v44
  %v9492 = vunpack.c.h.bf16 %v55
  %v9493 = vunpack.c.l.bf16 %v56
  %v9494 = vunpack.c.h.bf16 %v67
  %v9495 = vunpack.c.l.bf16 %v68
  %9508 = vrot.lane.b32.xlu0 %v9478, 64
  %v9509 = vpop.permute.xlu0 %9508
  %9510 = vrot.lane.b32.xlu0 %v9488, 64
  %v9511 = vpop.permute.xlu0 %9510
  %9512 = vrot.lane.b32.xlu0 %v9489, 64
  %v9513 = vpop.permute.xlu0 %9512
  %9514 = vrot.lane.b32.xlu0 %v9481, 64
  %v9515 = vpop.permute.xlu0 %9514
  %9516 = vrot.lane.b32.xlu0 %v9490, 64
  %v9517 = vpop.permute.xlu0 %9516
  %9518 = vrot.lane.b32.xlu0 %v9491, 64
  %v9519 = vpop.permute.xlu0 %9518
  %9520 = vrot.lane.b32.xlu0 %v9484, 64
  %v9521 = vpop.permute.xlu0 %9520
  %9522 = vrot.lane.b32.xlu0 %v9492, 64
  %v9523 = vpop.permute.xlu0 %9522
  %9524 = vrot.lane.b32.xlu0 %v9493, 64
  %v9525 = vpop.permute.xlu0 %9524
  %9526 = vrot.lane.b32.xlu0 %v9487, 64
  %v9527 = vpop.permute.xlu0 %9526
  %9528 = vrot.lane.b32.xlu0 %v9494, 64
  %v9529 = vpop.permute.xlu0 %9528
  %9530 = vrot.lane.b32.xlu0 %v9495, 64
  %v9531 = vpop.permute.xlu0 %9530
  %v9532 = vsel %vm3908, %v9509, %v9511
  %v9533 = vsel %vm3908, %v9511, %v9513
  %v9534 = vsel %vm3908, %v9515, %v9517
  %v9535 = vsel %vm3908, %v9517, %v9519
  %v9536 = vsel %vm3908, %v9521, %v9523
  %v9537 = vsel %vm3908, %v9523, %v9525
  %v9538 = vsel %vm3908, %v9527, %v9529
  %v9539 = vsel %vm3908, %v9529, %v9531
  %v9552 = vadd.f32 %v9476, %v9532
  %v9553 = vadd.f32 %v9477, %v9533
  %v9554 = vadd.f32 %v9478, %v9513
  %v9555 = vadd.f32 %v9479, %v9534
  %v9556 = vadd.f32 %v9480, %v9535
  %v9557 = vadd.f32 %v9481, %v9519
  %v9558 = vadd.f32 %v9482, %v9536
  %v9559 = vadd.f32 %v9483, %v9537
  %v9560 = vadd.f32 %v9484, %v9525
  %v9561 = vadd.f32 %v9485, %v9538
  %v9562 = vadd.f32 %v9486, %v9539
  %v9563 = vadd.f32 %v9487, %v9531
  %v9564 = vrot.slane %v32, 4
  %v9565 = vrot.slane %v33, 4
  %v9566 = vrot.slane %v44, 4
  %v9567 = vrot.slane %v45, 4
  %v9568 = vrot.slane %v56, 4
  %v9569 = vrot.slane %v57, 4
  %v9570 = vrot.slane %v68, 4
  %v9571 = vrot.slane %v69, 4
  %vm9572 = vcmask 1043456
  %v9573 = vsel %vm9572, %v9564, %v9565
  %v9574 = vsel %vm9572, %v9566, %v9567
  %v9575 = vsel %vm9572, %v9568, %v9569
  %v9576 = vsel %vm9572, %v9570, %v9571
  %v9585 = vunpack.c.l.bf16 %v9573
  %v9586 = vunpack.c.h.bf16 %v9573
  %v9587 = vunpack.c.l.bf16 %v9565
  %v9588 = vunpack.c.l.bf16 %v9574
  %v9589 = vunpack.c.h.bf16 %v9574
  %v9590 = vunpack.c.l.bf16 %v9567
  %v9591 = vunpack.c.l.bf16 %v9575
  %v9592 = vunpack.c.h.bf16 %v9575
  %v9593 = vunpack.c.l.bf16 %v9569
  %v9594 = vunpack.c.l.bf16 %v9576
  %v9595 = vunpack.c.h.bf16 %v9576
  %v9596 = vunpack.c.l.bf16 %v9571
  %v9597 = vadd.f32 %v9552, %v9585
  %v9598 = vadd.f32 %v9553, %v9586
  %v9599 = vadd.f32 %v9554, %v9587
  %v9600 = vadd.f32 %v9555, %v9588
  %v9601 = vadd.f32 %v9556, %v9589
  %v9602 = vadd.f32 %v9557, %v9590
  %v9603 = vadd.f32 %v9558, %v9591
  %v9604 = vadd.f32 %v9559, %v9592
  %v9605 = vadd.f32 %v9560, %v9593
  %v9606 = vadd.f32 %v9561, %v9594
  %v9607 = vadd.f32 %v9562, %v9595
  %v9608 = vadd.f32 %v9563, %v9596
  %9609 = vrot.lane.b32.xlu0 %v33, 64
  %v9610 = vpop.permute.xlu0 %9609
  %9611 = vrot.lane.b32.xlu0 %v34, 64
  %v9612 = vpop.permute.xlu0 %9611
  %9613 = vrot.lane.b32.xlu0 %v45, 64
  %v9614 = vpop.permute.xlu0 %9613
  %9615 = vrot.lane.b32.xlu0 %v46, 64
  %v9616 = vpop.permute.xlu0 %9615
  %9617 = vrot.lane.b32.xlu0 %v57, 64
  %v9618 = vpop.permute.xlu0 %9617
  %9619 = vrot.lane.b32.xlu0 %v58, 64
  %v9620 = vpop.permute.xlu0 %9619
  %9621 = vrot.lane.b32.xlu0 %v69, 64
  %v9622 = vpop.permute.xlu0 %9621
  %9623 = vrot.lane.b32.xlu0 %v70, 64
  %v9624 = vpop.permute.xlu0 %9623
  %v9625 = vrot.slane %v9610, 4
  %v9626 = vrot.slane %v9612, 4
  %v9627 = vrot.slane %v9614, 4
  %v9628 = vrot.slane %v9616, 4
  %v9629 = vrot.slane %v9618, 4
  %v9630 = vrot.slane %v9620, 4
  %v9631 = vrot.slane %v9622, 4
  %v9632 = vrot.slane %v9624, 4
  %v9633 = vsel %vm9572, %v9625, %v9626
  %vm9634 = vcmask 523264
  %v9635 = vsel %vm9634, %v9633, %v9612
  %v9636 = vsel %vm9572, %v9627, %v9628
  %v9637 = vsel %vm9634, %v9636, %v9616
  %v9638 = vsel %vm9572, %v9629, %v9630
  %v9639 = vsel %vm9634, %v9638, %v9620
  %v9640 = vsel %vm9572, %v9631, %v9632
  %v9641 = vsel %vm9634, %v9640, %v9624
  %v9650 = vunpack.c.l.bf16 %v9635
  %v9651 = vunpack.c.h.bf16 %v9635
  %v9652 = vunpack.c.l.bf16 %v9626
  %v9653 = vunpack.c.l.bf16 %v9637
  %v9654 = vunpack.c.h.bf16 %v9637
  %v9655 = vunpack.c.l.bf16 %v9628
  %v9656 = vunpack.c.l.bf16 %v9639
  %v9657 = vunpack.c.h.bf16 %v9639
  %v9658 = vunpack.c.l.bf16 %v9630
  %v9659 = vunpack.c.l.bf16 %v9641
  %v9660 = vunpack.c.h.bf16 %v9641
  %v9661 = vunpack.c.l.bf16 %v9632
  %v9662 = vadd.f32 %v9597, %v9650
  %v9663 = vadd.f32 %v9598, %v9651
  %v9664 = vadd.f32 %v9599, %v9652
  %v9665 = vadd.f32 %v9600, %v9653
  %v9666 = vadd.f32 %v9601, %v9654
  %v9667 = vadd.f32 %v9602, %v9655
  %v9668 = vadd.f32 %v9603, %v9656
  %v9669 = vadd.f32 %v9604, %v9657
  %v9670 = vadd.f32 %v9605, %v9658
  %v9671 = vadd.f32 %v9606, %v9659
  %v9672 = vadd.f32 %v9607, %v9660
  %v9673 = vadd.f32 %v9608, %v9661
  %v9674 = vunpack.c.l.bf16 %v35
  %v9675 = vunpack.c.h.bf16 %v35
  %v9676 = vunpack.c.l.bf16 %v36
  %v9677 = vunpack.c.l.bf16 %v47
  %v9678 = vunpack.c.h.bf16 %v47
  %v9679 = vunpack.c.l.bf16 %v48
  %v9680 = vunpack.c.l.bf16 %v59
  %v9681 = vunpack.c.h.bf16 %v59
  %v9682 = vunpack.c.l.bf16 %v60
  %v9683 = vunpack.c.l.bf16 %v71
  %v9684 = vunpack.c.h.bf16 %v71
  %v9685 = vunpack.c.l.bf16 %v72
  %v9686 = vadd.f32 %v9662, %v9674
  %v9687 = vadd.f32 %v9663, %v9675
  %v9688 = vadd.f32 %v9664, %v9676
  %v9689 = vadd.f32 %v9665, %v9677
  %v9690 = vadd.f32 %v9666, %v9678
  %v9691 = vadd.f32 %v9667, %v9679
  %v9692 = vadd.f32 %v9668, %v9680
  %v9693 = vadd.f32 %v9669, %v9681
  %v9694 = vadd.f32 %v9670, %v9682
  %v9695 = vadd.f32 %v9671, %v9683
  %v9696 = vadd.f32 %v9672, %v9684
  %v9697 = vadd.f32 %v9673, %v9685
  %v9698 = vunpack.c.h.bf16 %v36
  %v9699 = vunpack.c.l.bf16 %v37
  %v9700 = vunpack.c.h.bf16 %v48
  %v9701 = vunpack.c.l.bf16 %v49
  %v9702 = vunpack.c.h.bf16 %v60
  %v9703 = vunpack.c.l.bf16 %v61
  %v9704 = vunpack.c.h.bf16 %v72
  %v9705 = vunpack.c.l.bf16 %v73
  %9718 = vrot.lane.b32.xlu0 %v9676, 64
  %v9719 = vpop.permute.xlu0 %9718
  %9720 = vrot.lane.b32.xlu0 %v9698, 64
  %v9721 = vpop.permute.xlu0 %9720
  %9722 = vrot.lane.b32.xlu0 %v9699, 64
  %v9723 = vpop.permute.xlu0 %9722
  %9724 = vrot.lane.b32.xlu0 %v9679, 64
  %v9725 = vpop.permute.xlu0 %9724
  %9726 = vrot.lane.b32.xlu0 %v9700, 64
  %v9727 = vpop.permute.xlu0 %9726
  %9728 = vrot.lane.b32.xlu0 %v9701, 64
  %v9729 = vpop.permute.xlu0 %9728
  %9730 = vrot.lane.b32.xlu0 %v9682, 64
  %v9731 = vpop.permute.xlu0 %9730
  %9732 = vrot.lane.b32.xlu0 %v9702, 64
  %v9733 = vpop.permute.xlu0 %9732
  %9734 = vrot.lane.b32.xlu0 %v9703, 64
  %v9735 = vpop.permute.xlu0 %9734
  %9736 = vrot.lane.b32.xlu0 %v9685, 64
  %v9737 = vpop.permute.xlu0 %9736
  %9738 = vrot.lane.b32.xlu0 %v9704, 64
  %v9739 = vpop.permute.xlu0 %9738
  %9740 = vrot.lane.b32.xlu0 %v9705, 64
  %v9741 = vpop.permute.xlu0 %9740
  %v9742 = vsel %vm3908, %v9719, %v9721
  %v9743 = vsel %vm3908, %v9721, %v9723
  %v9744 = vsel %vm3908, %v9725, %v9727
  %v9745 = vsel %vm3908, %v9727, %v9729
  %v9746 = vsel %vm3908, %v9731, %v9733
  %v9747 = vsel %vm3908, %v9733, %v9735
  %v9748 = vsel %vm3908, %v9737, %v9739
  %v9749 = vsel %vm3908, %v9739, %v9741
  %v9762 = vadd.f32 %v9686, %v9742
  %v9763 = vadd.f32 %v9687, %v9743
  %v9764 = vadd.f32 %v9688, %v9723
  %v9765 = vadd.f32 %v9689, %v9744
  %v9766 = vadd.f32 %v9690, %v9745
  %v9767 = vadd.f32 %v9691, %v9729
  %v9768 = vadd.f32 %v9692, %v9746
  %v9769 = vadd.f32 %v9693, %v9747
  %v9770 = vadd.f32 %v9694, %v9735
  %v9771 = vadd.f32 %v9695, %v9748
  %v9772 = vadd.f32 %v9696, %v9749
  %v9773 = vadd.f32 %v9697, %v9741
  %v9774 = vrot.slane %v37, 4
  %v9775 = vrot.slane %v38, 4
  %v9776 = vrot.slane %v49, 4
  %v9777 = vrot.slane %v50, 4
  %v9778 = vrot.slane %v61, 4
  %v9779 = vrot.slane %v62, 4
  %v9780 = vrot.slane %v73, 4
  %v9781 = vrot.slane %v74, 4
  %v9782 = vsel %vm9572, %v9774, %v9775
  %v9783 = vsel %vm9572, %v9776, %v9777
  %v9784 = vsel %vm9572, %v9778, %v9779
  %v9785 = vsel %vm9572, %v9780, %v9781
  %v9794 = vunpack.c.l.bf16 %v9782
  %v9795 = vunpack.c.h.bf16 %v9782
  %v9796 = vunpack.c.l.bf16 %v9775
  %v9797 = vunpack.c.l.bf16 %v9783
  %v9798 = vunpack.c.h.bf16 %v9783
  %v9799 = vunpack.c.l.bf16 %v9777
  %v9800 = vunpack.c.l.bf16 %v9784
  %v9801 = vunpack.c.h.bf16 %v9784
  %v9802 = vunpack.c.l.bf16 %v9779
  %v9803 = vunpack.c.l.bf16 %v9785
  %v9804 = vunpack.c.h.bf16 %v9785
  %v9805 = vunpack.c.l.bf16 %v9781
  %v9806 = vadd.f32 %v9762, %v9794
  %v9807 = vadd.f32 %v9763, %v9795
  %v9808 = vadd.f32 %v9764, %v9796
  %v9809 = vadd.f32 %v9765, %v9797
  %v9810 = vadd.f32 %v9766, %v9798
  %v9811 = vadd.f32 %v9767, %v9799
  %v9812 = vadd.f32 %v9768, %v9800
  %v9813 = vadd.f32 %v9769, %v9801
  %v9814 = vadd.f32 %v9770, %v9802
  %v9815 = vadd.f32 %v9771, %v9803
  %v9816 = vadd.f32 %v9772, %v9804
  %v9817 = vadd.f32 %v9773, %v9805
  %9818 = vrot.lane.b32.xlu0 %v38, 64
  %v9819 = vpop.permute.xlu0 %9818
  %9820 = vrot.lane.b32.xlu0 %v39, 64
  %v9821 = vpop.permute.xlu0 %9820
  %9822 = vrot.lane.b32.xlu0 %v50, 64
  %v9823 = vpop.permute.xlu0 %9822
  %9824 = vrot.lane.b32.xlu0 %v51, 64
  %v9825 = vpop.permute.xlu0 %9824
  %9826 = vrot.lane.b32.xlu0 %v62, 64
  %v9827 = vpop.permute.xlu0 %9826
  %9828 = vrot.lane.b32.xlu0 %v63, 64
  %v9829 = vpop.permute.xlu0 %9828
  %9830 = vrot.lane.b32.xlu0 %v74, 64
  %v9831 = vpop.permute.xlu0 %9830
  %9832 = vrot.lane.b32.xlu0 %v75, 64
  %v9833 = vpop.permute.xlu0 %9832
  %v9834 = vrot.slane %v9819, 4
  %v9835 = vrot.slane %v9821, 4
  %v9836 = vrot.slane %v9823, 4
  %v9837 = vrot.slane %v9825, 4
  %v9838 = vrot.slane %v9827, 4
  %v9839 = vrot.slane %v9829, 4
  %v9840 = vrot.slane %v9831, 4
  %v9841 = vrot.slane %v9833, 4
  %v9842 = vsel %vm9572, %v9834, %v9835
  %v9843 = vsel %vm9634, %v9842, %v9821
  %v9844 = vsel %vm9572, %v9836, %v9837
  %v9845 = vsel %vm9634, %v9844, %v9825
  %v9846 = vsel %vm9572, %v9838, %v9839
  %v9847 = vsel %vm9634, %v9846, %v9829
  %v9848 = vsel %vm9572, %v9840, %v9841
  %v9849 = vsel %vm9634, %v9848, %v9833
  %v9858 = vunpack.c.l.bf16 %v9843
  %v9859 = vunpack.c.h.bf16 %v9843
  %v9860 = vunpack.c.l.bf16 %v9835
  %v9861 = vunpack.c.l.bf16 %v9845
  %v9862 = vunpack.c.h.bf16 %v9845
  %v9863 = vunpack.c.l.bf16 %v9837
  %v9864 = vunpack.c.l.bf16 %v9847
  %v9865 = vunpack.c.h.bf16 %v9847
  %v9866 = vunpack.c.l.bf16 %v9839
  %v9867 = vunpack.c.l.bf16 %v9849
  %v9868 = vunpack.c.h.bf16 %v9849
  %v9869 = vunpack.c.l.bf16 %v9841
  %v9870 = vadd.f32 %v9806, %v9858
  %v9871 = vadd.f32 %v9807, %v9859
  %v9872 = vadd.f32 %v9808, %v9860
  %v9873 = vadd.f32 %v9809, %v9861
  %v9874 = vadd.f32 %v9810, %v9862
  %v9875 = vadd.f32 %v9811, %v9863
  %v9876 = vadd.f32 %v9812, %v9864
  %v9877 = vadd.f32 %v9813, %v9865
  %v9878 = vadd.f32 %v9814, %v9866
  %v9879 = vadd.f32 %v9815, %v9867
  %v9880 = vadd.f32 %v9816, %v9868
  %v9881 = vadd.f32 %v9817, %v9869
  %v9882 = vunpack.c.l.bf16 %v40
  %v9883 = vunpack.c.h.bf16 %v40
  %v9884 = vunpack.c.l.bf16 %v41
  %v9885 = vunpack.c.l.bf16 %v52
  %v9886 = vunpack.c.h.bf16 %v52
  %v9887 = vunpack.c.l.bf16 %v53
  %v9888 = vunpack.c.l.bf16 %v64
  %v9889 = vunpack.c.h.bf16 %v64
  %v9890 = vunpack.c.l.bf16 %v65
  %v9891 = vunpack.c.l.bf16 %v76
  %v9892 = vunpack.c.h.bf16 %v76
  %v9893 = vunpack.c.l.bf16 %v77
  %v9894 = vadd.f32 %v9870, %v9882
  %v9895 = vadd.f32 %v9871, %v9883
  %v9896 = vadd.f32 %v9872, %v9884
  %v9897 = vadd.f32 %v9873, %v9885
  %v9898 = vadd.f32 %v9874, %v9886
  %v9899 = vadd.f32 %v9875, %v9887
  %v9900 = vadd.f32 %v9876, %v9888
  %v9901 = vadd.f32 %v9877, %v9889
  %v9902 = vadd.f32 %v9878, %v9890
  %v9903 = vadd.f32 %v9879, %v9891
  %v9904 = vadd.f32 %v9880, %v9892
  %v9905 = vadd.f32 %v9881, %v9893
  %v9906 = vmul.f32 %v9894, 0.11111111
  %v9907 = vmul.f32 %v9895, 0.11111111
  %v9908 = vmul.f32 %v9896, 0.11111111
  %v9909 = vmul.f32 %v9897, 0.11111111
  %v9910 = vmul.f32 %v9898, 0.11111111
  %v9911 = vmul.f32 %v9899, 0.11111111
  %v9912 = vmul.f32 %v9900, 0.11111111
  %v9913 = vmul.f32 %v9901, 0.11111111
  %v9914 = vmul.f32 %v9902, 0.11111111
  %v9915 = vmul.f32 %v9903, 0.11111111
  %v9916 = vmul.f32 %v9904, 0.11111111
  %v9917 = vmul.f32 %v9905, 0.11111111
  %9918 = vst [vmem:[%s8 + $0x30] sm:$0xff] %v9906
  %9919 = vst [vmem:[%s8 + $0x38] sm:$0xff] %v9907
  %9920 = vst.msk [vmem:[%s8 + $0x40] sm:$0xff] %vm3908, %v9908
  %9921 = vst [vmem:[%s8 + $0x78] sm:$0xff] %v9909
  %9922 = vst [vmem:[%s8 + $0x80] sm:$0xff] %v9910
  %9923 = vst.msk [vmem:[%s8 + $0x88] sm:$0xff] %vm3908, %v9911
  %9924 = vst [vmem:[%s8 + $0xc0] sm:$0xff] %v9912
  %9925 = vst [vmem:[%s8 + $0xc8] sm:$0xff] %v9913
  %9926 = vst.msk [vmem:[%s8 + $0xd0] sm:$0xff] %vm3908, %v9914
  %9927 = vst [vmem:[%s8 + $0x108] sm:$0xff] %v9915
  %9928 = vst [vmem:[%s8 + $0x110] sm:$0xff] %v9916
  %9929 = vst.msk [vmem:[%s8 + $0x118] sm:$0xff] %vm3908, %v9917
  // Predicated region
  $region34: #{mixed_b_forward.5} parent=0 // pred_check
    _
  $region35: #{mixed_b_forward.5} parent=0 // pred_check_branch
    %9931 = sbr.rel (0) target = $region37
  $region36: #{mixed_b_forward.5} parent=0 // pred_region
    _
  $region37: #{mixed_b_forward.5} parent=0 // pred_fallthru
    _
  // Predicated region
  $region38: #{mixed_b_forward.5} parent=0 // pred_check
    _
  $region39: #{mixed_b_forward.5} parent=0 // pred_check_branch
    %9933 = sbr.rel (0) target = $region41
  $region40: #{mixed_b_forward.5} parent=0 // pred_region
    _
  $region41: #{mixed_b_forward.5} parent=0 // pred_fallthru
    _

</llo_original>
